<compile_context>
chip_gen: v7x
topology: tpu7x:2x2x1
jax: 0.10.0
libtpu: 0.0.40
codegen_flags: <defaults>
</compile_context>

<pallas_src>
import jax
import jax.numpy as jnp
from jax.experimental import pallas as pl
from jax.experimental.pallas import tpu as pltpu

# ---------------- problem constants (fixed by the PyTorch module) -----------
C_IN, H_IN, W_IN = 3, 32, 32
K = 7
C_OUT = 32                          # conv output channels
H_CONV = H_IN - K + 1               # 26
W_CONV = W_IN - K + 1               # 26
H_POOL, W_POOL = H_CONV // 2, W_CONV // 2    # 13, 13
N_POS = H_POOL * W_POOL             # 169 pooled spatial positions
FLAT = C_OUT * N_POS                # 5408 (PyTorch flatten size)
N_CLS = 10

# ---------------- padded / tiled sizes ---------------------------------------
K_PATCH = C_IN * K * K              # 147 — kept UNpadded in HBM (full-dim block)
C_PAD = 128                         # conv output channels padded to lane width
O_PAD = 128                         # linear outputs padded to lane width
FLAT_PAD = N_POS * C_PAD            # 21632 channel-padded flatten width

NB_CONV_MAX = 16                    # images / conv+pool step (~11 MiB dbl-buffered)
NB_LIN_MAX = 64                     # rows / linear step
VMEM_LIMIT_BYTES = 48 * 1024 * 1024  # below v7x's 64 MiB physical, above v5e's 16 MiB default


# ---------------------------------------------------------------- kernels ---
def _conv_pool_kernel(p_ref, w_ref, b_ref, o_ref):
    # p_ref : (4, rows, 147) bf16 — the 4 elements of every 2x2 pooling window,
    #         as 4 contiguous quarters of im2col rows (rows = nb_conv*169).
    # w_ref : (147, 128) bf16  (conv weight, output-channel padded)
    # b_ref : (1, 128)   f32   (conv bias, output-channel padded)
    # o_ref : (1, rows, 128) bf16  (pooled NHWC features, channel padded)
    w = w_ref[...]
    c0 = jnp.dot(p_ref[0], w, preferred_element_type=jnp.float32)
    c1 = jnp.dot(p_ref[1], w, preferred_element_type=jnp.float32)
    c2 = jnp.dot(p_ref[2], w, preferred_element_type=jnp.float32)
    c3 = jnp.dot(p_ref[3], w, preferred_element_type=jnp.float32)
    # max(x) + b == max(x + b) for a per-channel bias: add bias once, in f32.
    pooled = jnp.maximum(jnp.maximum(c0, c1), jnp.maximum(c2, c3)) + b_ref[...]
    o_ref[0] = pooled.astype(o_ref.dtype)


def _linear_kernel(x_ref, w_ref, b_ref, o_ref):
    # x_ref : (nb_lin, FLAT_PAD) bf16
    # w_ref : (FLAT_PAD, 128) bf16  — VMEM-resident (constant index_map)
    # b_ref : (1, 128) f32          o_ref : (nb_lin, 128) f32
    o_ref[...] = (jnp.dot(x_ref[...], w_ref[...],
                          preferred_element_type=jnp.float32) + b_ref[...])


# ---------------------------------------------------------- pallas wrappers --
def _conv_pool_call(patches, w_conv, b_conv, n_tiles, nb_conv):
    rows = nb_conv * N_POS
    return pl.pallas_call(
        _conv_pool_kernel,
        grid=(n_tiles,),
        in_specs=[
            pl.BlockSpec((4, rows, K_PATCH), lambda t: (t, 0, 0)),
            pl.BlockSpec((K_PATCH, C_PAD), lambda t: (0, 0)),
            pl.BlockSpec((1, C_PAD), lambda t: (0, 0)),
        ],
        out_specs=pl.BlockSpec((1, rows, C_PAD), lambda t: (t, 0, 0)),
        out_shape=jax.ShapeDtypeStruct((n_tiles, rows, C_PAD), jnp.bfloat16),
        compiler_params=pltpu.CompilerParams(
            dimension_semantics=("parallel",),
            vmem_limit_bytes=VMEM_LIMIT_BYTES),
    )(patches, w_conv, b_conv)


def _linear_call(flat, w_lin, b_lin, nb_lin):
    n_pad = flat.shape[0]
    return pl.pallas_call(
        _linear_kernel,
        grid=(n_pad // nb_lin,),
        in_specs=[
            pl.BlockSpec((nb_lin, FLAT_PAD), lambda i: (i, 0)),
            # Constant index_map: the ~5.3 MiB bf16 weight is fetched once and
            # stays resident in VMEM across all batch tiles (no K grid axis).
            pl.BlockSpec((FLAT_PAD, O_PAD), lambda i: (0, 0)),
            pl.BlockSpec((1, O_PAD), lambda i: (0, 0)),
        ],
        out_specs=pl.BlockSpec((nb_lin, O_PAD), lambda i: (i, 0)),
        out_shape=jax.ShapeDtypeStruct((n_pad, O_PAD), jnp.float32),
        compiler_params=pltpu.CompilerParams(
            dimension_semantics=("parallel",),
            vmem_limit_bytes=VMEM_LIMIT_BYTES),
    )(flat, w_lin, b_lin)


# --------------------------------------------------- one-time parameter prep -
def prepare_params(params):
    conv_w, conv_b, lin_w, lin_b = params
    # conv weight (32,3,7,7) -> (147,32) -> zero-pad output channels to 128, bf16.
    w_conv = conv_w.reshape(C_OUT, K_PATCH).T
    w_conv = jnp.pad(w_conv, ((0, 0), (0, C_PAD - C_OUT))).astype(jnp.bfloat16)
    b_conv = jnp.pad(conv_b, (0, C_PAD - C_OUT)).reshape(1, C_PAD).astype(jnp.float32)

    # linear weight: PyTorch flatten order is (c, hp, wp).  Re-order to the
    # kernel's NHWC (hp, wp, c) feature layout and scatter into the
    # channel/output-padded (169*128, 128) slab; padded conv channels hit
    # zero weight rows so results are unchanged.
    w3 = lin_w.reshape(N_CLS, C_OUT, H_POOL, W_POOL).transpose(2, 3, 1, 0)
    w3 = w3.reshape(N_POS, C_OUT, N_CLS)
    w_lin = jnp.zeros((N_POS, C_PAD, O_PAD), jnp.float32)
    w_lin = w_lin.at[:, :C_OUT, :N_CLS].set(w3)
    w_lin = w_lin.reshape(FLAT_PAD, O_PAD).astype(jnp.bfloat16)
    b_lin = jnp.pad(lin_b, (0, O_PAD - N_CLS)).reshape(1, O_PAD).astype(jnp.float32)
    return w_conv, b_conv, w_lin, b_lin


# ------------------------------------------------------------------- glue ---
def _im2col_quarters(x, n_tiles, nb_conv):
    # x: (n_conv_pad, 3, 32, 32) bf16 -> (4*n_tiles, nb_conv*169, 147) bf16,
    # rows ordered (tile, quarter=(di,dj), image-in-tile, pooled-pos=(hp,wp))
    # so the 2x2 maxpool is an elementwise max over the leading quarter axis.
    # TODO(synk): still host-side XLA glue; in-kernel 7x7 extraction from the
    # raw NHWC tile would cut the patch HBM stream further.
    n_p = x.shape[0]
    cols = jnp.stack(
        [jnp.stack([x[:, :, i:i + H_CONV, j:j + W_CONV] for j in range(K)],
                   axis=-1) for i in range(K)],
        axis=-2)                                       # (Np, C, Ho, Wo, Ki, Kj)
    cols = cols.transpose(0, 2, 3, 1, 4, 5)            # (Np, Ho, Wo, C, Ki, Kj)
    cols = cols.reshape(n_p, H_CONV, W_CONV, K_PATCH)
    cols = cols.reshape(n_tiles, nb_conv, H_POOL, 2, W_POOL, 2, K_PATCH)
    cols = cols.transpose(0, 3, 5, 1, 2, 4, 6)         # (t, di, dj, nl, hp, wp, k)
    return cols.reshape(4 * n_tiles, nb_conv * N_POS, K_PATCH)


def _round_up(n, m):
    return ((n + m - 1) // m) * m


def _pick_conv_tile(n):
    # Images per conv+pool grid step: capped so the double-buffered patch block
    # stays ~11 MiB of VMEM, and small enough that batches >= 2 still get >= 2
    # 'parallel' grid steps (both v7x TensorCores busy).
    return min(NB_CONV_MAX, max(1, _round_up(n, 2) // 2))


def _pick_lin_tile(n):
    # Rows per linear grid step: a multiple of 8 (sublane tile), capped at 64,
    # and chosen so batches >= 16 get >= 2 'parallel' grid steps.
    target = min(NB_LIN_MAX, max(8, _round_up(n, 8) // 2))
    return (target // 8) * 8


@jax.jit
def vanilla_cnn_forward(x, prepared):
    w_conv, b_conv, w_lin, b_lin = prepared
    n = x.shape[0]

    # Decoupled batch paddings: conv pads to a small multiple (dead images cost
    # real im2col/DMA work), the linear to a larger one (dead rows are nearly
    # free against the VMEM-resident weight).
    nb_conv = _pick_conv_tile(n)
    nb_lin = _pick_lin_tile(n)
    n_conv_pad = _round_up(n, nb_conv)
    n_lin_pad = _round_up(n, nb_lin)
    n_conv_tiles = n_conv_pad // nb_conv

    # bf16 BEFORE the im2col expansion: halves the host-side glue traffic.
    x = x.astype(jnp.bfloat16)
    x = jnp.pad(x, ((0, n_conv_pad - n), (0, 0), (0, 0), (0, 0)))

    patches = _im2col_quarters(x, n_conv_tiles, nb_conv)            # bf16, K=147
    pooled = _conv_pool_call(patches, w_conv, b_conv,
                             n_conv_tiles, nb_conv)                 # (T, rows, 128) bf16
    # Pure-bitcast reshape: (T, nb_conv*169, 128) -> (n_conv_pad, 169*128).
    flat = pooled.reshape(n_conv_pad, FLAT_PAD)
    if n_lin_pad > n_conv_pad:
        flat = jnp.pad(flat, ((0, n_lin_pad - n_conv_pad), (0, 0)))
    elif n_lin_pad < n_conv_pad:
        flat = flat[:n_lin_pad]
    out = _linear_call(flat, w_lin, b_lin, nb_lin)                  # (n_lin_pad, 128) f32
    return out[:n, :N_CLS]


# -------------------------------------------------------------- reference ---
def _reference_forward(x, params):
    conv_w, conv_b, lin_w, lin_b = params
    conv = jax.lax.conv_general_dilated(
        x, conv_w, window_strides=(1, 1), padding="VALID",
        dimension_numbers=("NCHW", "OIHW", "NCHW"),
        precision=jax.lax.Precision.HIGHEST)
    conv = conv + conv_b[None, :, None, None]
    pooled = jax.lax.reduce_window(
        conv, -jnp.inf, jax.lax.max, (1, 1, 2, 2), (1, 1, 2, 2), "VALID")
    flat = pooled.reshape(x.shape[0], -1)
    return jnp.dot(flat, lin_w.T, precision=jax.lax.Precision.HIGHEST) + lin_b


if __name__ == "__main__":
    key = jax.random.PRNGKey(0)
    k1, k2, k3, k4, k5 = jax.random.split(key, 5)

    # Deterministic synthetic parameters with the module's shapes.
    conv_w = jax.random.normal(k1, (32, 3, 7, 7), jnp.float32) * 0.05
    conv_b = jax.random.normal(k2, (32,), jnp.float32) * 0.05
    lin_w = jax.random.normal(k3, (10, 5408), jnp.float32) * 0.02
    lin_b = jax.random.normal(k4, (10,), jnp.float32) * 0.02
    params = (conv_w, conv_b, lin_w, lin_b)
    prepared = prepare_params(params)   # one-time, hoisted out of the forward

    # Spatial size must be 32x32 so the flatten gives 32*13*13 = 5408 features.
    x = jax.random.normal(k5, (2, 3, 32, 32), jnp.float32)

    out = jax.block_until_ready(vanilla_cnn_forward(x, prepared))
    ref = jax.block_until_ready(_reference_forward(x, params))

    assert out.shape == (2, 10), out.shape
    err = float(jnp.max(jnp.abs(out - ref)))
    assert jnp.allclose(out, ref, atol=5e-2, rtol=5e-2), f"max abs diff = {err}"
    print("KERNEL_OK")
</pallas_src>

<mosaic_0001>
module attributes {stable_mosaic.version = 11 : i64} {
  func.func @_conv_pool_kernel(%arg0: i32, %arg1: memref<4x169x147xbf16, #tpu.memory_space<vmem>>, %arg2: memref<147x128xbf16, #tpu.memory_space<vmem>>, %arg3: memref<1x128xf32, #tpu.memory_space<vmem>>, %arg4: memref<1x169x128xbf16, #tpu.memory_space<vmem>>) attributes {dimension_semantics = [#tpu.dimension_semantics<parallel>], iteration_bounds = array<i64: 2>, scalar_prefetch = 0 : i64, scratch_operands = 0 : i64, tpu.core_type = #tpu.core_type<tc>, window_params = [{transform_indices = @transform_0, window_bounds = array<i64: 4, 169, 147>}, {pipeline_mode = #tpu.pipeline_mode<synchronous>, transform_indices = @transform_1, window_bounds = array<i64: 147, 128>}, {pipeline_mode = #tpu.pipeline_mode<synchronous>, transform_indices = @transform_2, window_bounds = array<i64: 1, 128>}, {transform_indices = @transform_3, window_bounds = array<i64: 1, 169, 128>}]} {
    %c0 = arith.constant 0 : index
    %c0_0 = arith.constant 0 : index
    %0 = vector.load %arg2[%c0, %c0_0] : memref<147x128xbf16, #tpu.memory_space<vmem>>, vector<147x128xbf16>
    %c0_1 = arith.constant 0 : index
    %c0_2 = arith.constant 0 : index
    %c0_3 = arith.constant 0 : index
    %1 = vector.load %arg1[%c0_1, %c0_2, %c0_3] : memref<4x169x147xbf16, #tpu.memory_space<vmem>>, vector<1x169x147xbf16>
    %2 = vector.shape_cast %1 : vector<1x169x147xbf16> to vector<169x147xbf16>
    %cst = arith.constant dense<0.000000e+00> : vector<169x128xf32>
    %3 = tpu.matmul %2, %0, %cst {dimension_numbers = #tpu.dot_dimension_numbers<[1], [0], [0], [1], [0, 0, 1, 1], [], []>} : vector<169x147xbf16>, vector<147x128xbf16>, vector<169x128xf32> -> vector<169x128xf32>
    %c1 = arith.constant 1 : index
    %c0_4 = arith.constant 0 : index
    %c0_5 = arith.constant 0 : index
    %4 = vector.load %arg1[%c1, %c0_4, %c0_5] : memref<4x169x147xbf16, #tpu.memory_space<vmem>>, vector<1x169x147xbf16>
    %5 = vector.shape_cast %4 : vector<1x169x147xbf16> to vector<169x147xbf16>
    %cst_6 = arith.constant dense<0.000000e+00> : vector<169x128xf32>
    %6 = tpu.matmul %5, %0, %cst_6 {dimension_numbers = #tpu.dot_dimension_numbers<[1], [0], [0], [1], [0, 0, 1, 1], [], []>} : vector<169x147xbf16>, vector<147x128xbf16>, vector<169x128xf32> -> vector<169x128xf32>
    %c2 = arith.constant 2 : index
    %c0_7 = arith.constant 0 : index
    %c0_8 = arith.constant 0 : index
    %7 = vector.load %arg1[%c2, %c0_7, %c0_8] : memref<4x169x147xbf16, #tpu.memory_space<vmem>>, vector<1x169x147xbf16>
    %8 = vector.shape_cast %7 : vector<1x169x147xbf16> to vector<169x147xbf16>
    %cst_9 = arith.constant dense<0.000000e+00> : vector<169x128xf32>
    %9 = tpu.matmul %8, %0, %cst_9 {dimension_numbers = #tpu.dot_dimension_numbers<[1], [0], [0], [1], [0, 0, 1, 1], [], []>} : vector<169x147xbf16>, vector<147x128xbf16>, vector<169x128xf32> -> vector<169x128xf32>
    %c3 = arith.constant 3 : index
    %c0_10 = arith.constant 0 : index
    %c0_11 = arith.constant 0 : index
    %10 = vector.load %arg1[%c3, %c0_10, %c0_11] : memref<4x169x147xbf16, #tpu.memory_space<vmem>>, vector<1x169x147xbf16>
    %11 = vector.shape_cast %10 : vector<1x169x147xbf16> to vector<169x147xbf16>
    %cst_12 = arith.constant dense<0.000000e+00> : vector<169x128xf32>
    %12 = tpu.matmul %11, %0, %cst_12 {dimension_numbers = #tpu.dot_dimension_numbers<[1], [0], [0], [1], [0, 0, 1, 1], [], []>} : vector<169x147xbf16>, vector<147x128xbf16>, vector<169x128xf32> -> vector<169x128xf32>
    %13 = arith.maximumf %3, %6 : vector<169x128xf32>
    %14 = arith.maximumf %9, %12 : vector<169x128xf32>
    %15 = arith.maximumf %13, %14 : vector<169x128xf32>
    %c0_13 = arith.constant 0 : index
    %c0_14 = arith.constant 0 : index
    %16 = vector.load %arg3[%c0_13, %c0_14] : memref<1x128xf32, #tpu.memory_space<vmem>>, vector<1x128xf32>
    %17 = vector.broadcast %16 : vector<1x128xf32> to vector<169x128xf32>
    %18 = arith.addf %15, %17 : vector<169x128xf32>
    %19 = arith.truncf %18 : vector<169x128xf32> to vector<169x128xbf16>
    %c0_15 = arith.constant 0 : index
    %c0_16 = arith.constant 0 : index
    %c0_17 = arith.constant 0 : index
    %20 = vector.load %arg4[%c0_15, %c0_16, %c0_17] : memref<1x169x128xbf16, #tpu.memory_space<vmem>>, vector<1x169x128xbf16>
    %21 = vector.shape_cast %20 : vector<1x169x128xbf16> to vector<169x128xbf16>
    %22 = vector.shape_cast %19 : vector<169x128xbf16> to vector<1x169x128xbf16>
    tpu.vector_store %arg4[%c0_15, %c0_16, %c0_17], %22 {strides = array<i32>} : memref<1x169x128xbf16, #tpu.memory_space<vmem>>, vector<1x169x128xbf16>,
    return
  }
  func.func @transform_0(%arg0: i32) -> (i32, i32, i32) {
    %c0_i32 = arith.constant 0 : i32
    %c0_i32_0 = arith.constant 0 : i32
    %c0_i32_1 = arith.constant 0 : i32
    return %arg0, %c0_i32, %c0_i32_0 : i32, i32, i32
  }
  func.func @transform_1(%arg0: i32) -> (i32, i32) {
    %c0_i32 = arith.constant 0 : i32
    %c0_i32_0 = arith.constant 0 : i32
    %c0_i32_1 = arith.constant 0 : i32
    return %c0_i32, %c0_i32_0 : i32, i32
  }
  func.func @transform_2(%arg0: i32) -> (i32, i32) {
    %c0_i32 = arith.constant 0 : i32
    %c0_i32_0 = arith.constant 0 : i32
    %c0_i32_1 = arith.constant 0 : i32
    return %c0_i32, %c0_i32_0 : i32, i32
  }
  func.func @transform_3(%arg0: i32) -> (i32, i32, i32) {
    %c0_i32 = arith.constant 0 : i32
    %c0_i32_0 = arith.constant 0 : i32
    %c0_i32_1 = arith.constant 0 : i32
    return %arg0, %c0_i32, %c0_i32_0 : i32, i32, i32
  }
}

module attributes {stable_mosaic.version = 11 : i64} {
  func.func @_linear_kernel(%arg0: i32, %arg1: memref<8x21632xbf16, #tpu.memory_space<vmem>>, %arg2: memref<21632x128xbf16, #tpu.memory_space<vmem>>, %arg3: memref<1x128xf32, #tpu.memory_space<vmem>>, %arg4: memref<8x128xf32, #tpu.memory_space<vmem>>) attributes {dimension_semantics = [#tpu.dimension_semantics<parallel>], iteration_bounds = array<i64: 1>, scalar_prefetch = 0 : i64, scratch_operands = 0 : i64, tpu.core_type = #tpu.core_type<tc>, window_params = [{transform_indices = @transform_0, window_bounds = array<i64: 8, 21632>}, {pipeline_mode = #tpu.pipeline_mode<synchronous>, transform_indices = @transform_1, window_bounds = array<i64: 21632, 128>}, {pipeline_mode = #tpu.pipeline_mode<synchronous>, transform_indices = @transform_2, window_bounds = array<i64: 1, 128>}, {transform_indices = @transform_3, window_bounds = array<i64: 8, 128>}]} {
    %c0 = arith.constant 0 : index
    %c0_0 = arith.constant 0 : index
    %0 = vector.load %arg1[%c0, %c0_0] : memref<8x21632xbf16, #tpu.memory_space<vmem>>, vector<8x21632xbf16>
    %c0_1 = arith.constant 0 : index
    %c0_2 = arith.constant 0 : index
    %1 = vector.load %arg2[%c0_1, %c0_2] : memref<21632x128xbf16, #tpu.memory_space<vmem>>, vector<21632x128xbf16>
    %cst = arith.constant dense<0.000000e+00> : vector<8x128xf32>
    %2 = tpu.matmul %0, %1, %cst {dimension_numbers = #tpu.dot_dimension_numbers<[1], [0], [0], [1], [0, 0, 1, 1], [], []>} : vector<8x21632xbf16>, vector<21632x128xbf16>, vector<8x128xf32> -> vector<8x128xf32>
    %c0_3 = arith.constant 0 : index
    %c0_4 = arith.constant 0 : index
    %3 = vector.load %arg3[%c0_3, %c0_4] : memref<1x128xf32, #tpu.memory_space<vmem>>, vector<1x128xf32>
    %4 = vector.broadcast %3 : vector<1x128xf32> to vector<8x128xf32>
    %5 = arith.addf %2, %4 : vector<8x128xf32>
    %c0_5 = arith.constant 0 : index
    %c0_6 = arith.constant 0 : index
    %6 = vector.load %arg4[%c0_5, %c0_6] : memref<8x128xf32, #tpu.memory_space<vmem>>, vector<8x128xf32>
    tpu.vector_store %arg4[%c0_5, %c0_6], %5 {strides = array<i32>} : memref<8x128xf32, #tpu.memory_space<vmem>>, vector<8x128xf32>,
    return
  }
  func.func @transform_0(%arg0: i32) -> (i32, i32) {
    %c0_i32 = arith.constant 0 : i32
    %c0_i32_0 = arith.constant 0 : i32
    return %arg0, %c0_i32 : i32, i32
  }
  func.func @transform_1(%arg0: i32) -> (i32, i32) {
    %c0_i32 = arith.constant 0 : i32
    %c0_i32_0 = arith.constant 0 : i32
    %c0_i32_1 = arith.constant 0 : i32
    return %c0_i32, %c0_i32_0 : i32, i32
  }
  func.func @transform_2(%arg0: i32) -> (i32, i32) {
    %c0_i32 = arith.constant 0 : i32
    %c0_i32_0 = arith.constant 0 : i32
    %c0_i32_1 = arith.constant 0 : i32
    return %c0_i32, %c0_i32_0 : i32, i32
  }
  func.func @transform_3(%arg0: i32) -> (i32, i32) {
    %c0_i32 = arith.constant 0 : i32
    %c0_i32_0 = arith.constant 0 : i32
    return %arg0, %c0_i32 : i32, i32
  }
}

</mosaic_0001>

<llo_original>
// kernel: vanilla_cnn_forward.2
$region0: #{vanilla_cnn_forward.2}
  #allocation0 [shape = 'u32[]', space=smem, size = 0x4, offset = 0x4, fixed_abs, tag = 'smem constant byte address 0x4 - core index']
  #allocation1 [shape = 'u32[144,128]{1,0:T(1,128)}', space=vmem, size = 0x12000, scoped, tag = 'internal scratch']
  %s0 = inlined_call_operand.vmem [shape: bf16[8,169,147], index: 0, kind: input, shape index: {}]
  %s1 = inlined_call_operand.vmem [shape: bf16[147,128], index: 1, kind: input, shape index: {}]
  %s2 = inlined_call_operand.vmem [shape: f32[1,128], index: 2, kind: input, shape index: {}]
  %s3 = inlined_call_operand.vmem [shape: bf16[2,169,128], index: 3, kind: output, shape index: {}]
  %s4 = sld [smem:[#allocation0]]
  $region45: #{vanilla_cnn_forward.2} parent=0
    _
  %s6 = ssub.s32 1, %s4
  %s7 = scalar_select 0, %s6, %s4
  loop: start=0, step=1, limit=4
  $region2: #{vanilla_cnn_forward.2} parent=0 // loop_pre_header
    _
  $region3: #{vanilla_cnn_forward.2} parent=0 // loop_header
    %s9 = sphi 0, %s13
    %p10 = scmp.ge.s32.totalorder %s9, 4
    %s19 = sphi 0, %s21
    %s22 = sphi 0, %s19
    %s23 = sphi 0, %s22
    %s39 = sphi 0, %s23
    %s43 = sphi 0, %s43
    %s45 = sphi 0, %s43
    %s46 = sphi 0, %s45
    %s60 = sphi 0, %s46
    %s64 = sphi 0, %s64
    %s66 = sphi 0, %s64
    %s67 = sphi 0, %s66
    %s81 = sphi 0, %s67
    %s87 = sphi 0, %s89
    %s90 = sphi 0, %s87
    %s91 = sphi 0, %s90
    %s107 = sphi 0, %s91
  $region4: #{vanilla_cnn_forward.2} parent=0 // loop_header_branch
    %12 = sbr.rel (%p10) target = $region8
  $region5: #{vanilla_cnn_forward.2} parent=0 // loop_body
    %s14 = ssub.s32 %s9, 1
    %s15 = ssub.s32 %s9, 2
    %s16 = sadd.s32 %s9, 1
    %s17 = ssub.s32 %s9, %s16
    %p18 = scmp.eq.s32.totalorder %s17, 0
    %s20 = sadd.s32 %s19, 1
    %s21 = scalar_select %p18, %s19, %s20
    %p24 = pneg %p18
    %p25 = scmp.eq.s32.totalorder %s9, 1
    %p26 = por %p24, %p25
    %p27 = scmp.ne.s32.totalorder %s19, %s22
    %p28 = scmp.eq.s32.totalorder %s9, 0
    %p29 = por %p27, %p28
    %p30 = scmp.ne.s32.totalorder %s19, %s22
    %p31 = scmp.eq.s32.totalorder %s14, 1
    %p32 = por %p30, %p31
    %p33 = scmp.ne.s32.totalorder %s22, %s23
    %p34 = scmp.eq.s32.totalorder %s14, 0
    %p35 = por %p33, %p34
    %p36 = scmp.ne.s32.totalorder %s22, %s23
    %p37 = scmp.eq.s32.totalorder %s15, 1
    %p38 = por %p36, %p37
    %p40 = scmp.ne.s32.totalorder %s23, %s39
    %p41 = scmp.eq.s32.totalorder %s15, 0
    %p42 = por %p40, %p41
    %s44 = sadd.s32 %s43, 1
    %p47 = scmp.eq.s32.totalorder %s9, 1
    %p48 = scmp.ne.s32.totalorder %s43, %s45
    %p49 = scmp.eq.s32.totalorder %s9, 0
    %p50 = por %p48, %p49
    %p51 = scmp.ne.s32.totalorder %s43, %s45
    %p52 = scmp.eq.s32.totalorder %s14, 1
    %p53 = por %p51, %p52
    %p54 = scmp.ne.s32.totalorder %s45, %s46
    %p55 = scmp.eq.s32.totalorder %s14, 0
    %p56 = por %p54, %p55
    %p57 = scmp.ne.s32.totalorder %s45, %s46
    %p58 = scmp.eq.s32.totalorder %s15, 1
    %p59 = por %p57, %p58
    %p61 = scmp.ne.s32.totalorder %s46, %s60
    %p62 = scmp.eq.s32.totalorder %s15, 0
    %p63 = por %p61, %p62
    %s65 = sadd.s32 %s64, 1
    %p68 = scmp.eq.s32.totalorder %s9, 1
    %p69 = scmp.ne.s32.totalorder %s64, %s66
    %p70 = scmp.eq.s32.totalorder %s9, 0
    %p71 = por %p69, %p70
    %p72 = scmp.ne.s32.totalorder %s64, %s66
    %p73 = scmp.eq.s32.totalorder %s14, 1
    %p74 = por %p72, %p73
    %p75 = scmp.ne.s32.totalorder %s66, %s67
    %p76 = scmp.eq.s32.totalorder %s14, 0
    %p77 = por %p75, %p76
    %p78 = scmp.ne.s32.totalorder %s66, %s67
    %p79 = scmp.eq.s32.totalorder %s15, 1
    %p80 = por %p78, %p79
    %p82 = scmp.ne.s32.totalorder %s67, %s81
    %p83 = scmp.eq.s32.totalorder %s15, 0
    %p84 = por %p82, %p83
    %s85 = ssub.s32 %s9, %s16
    %p86 = scmp.eq.s32.totalorder %s85, 0
    %s88 = sadd.s32 %s87, 1
    %s89 = scalar_select %p86, %s87, %s88
    %p92 = pneg %p86
    %p93 = scmp.eq.s32.totalorder %s9, 1
    %p94 = por %p92, %p93
    %p95 = scmp.ne.s32.totalorder %s87, %s90
    %p96 = scmp.eq.s32.totalorder %s9, 0
    %p97 = por %p95, %p96
    %p98 = scmp.ne.s32.totalorder %s87, %s90
    %p99 = scmp.eq.s32.totalorder %s14, 1
    %p100 = por %p98, %p99
    %p101 = scmp.ne.s32.totalorder %s90, %s91
    %p102 = scmp.eq.s32.totalorder %s14, 0
    %p103 = por %p101, %p102
    %p104 = scmp.ne.s32.totalorder %s90, %s91
    %p105 = scmp.eq.s32.totalorder %s15, 1
    %p106 = por %p104, %p105
    %p108 = scmp.ne.s32.totalorder %s91, %s107
    %p109 = scmp.eq.s32.totalorder %s15, 0
    %p110 = por %p108, %p109
    %p111 = scmp.le.s32.totalorder 1, %s9
    %p112 = scmp.lt.s32.totalorder %s9, 3
    %p113 = pnand %p111, %p112
    %p114 = pneg %p113
    // Predicated region
    $region9: #{vanilla_cnn_forward.2} parent=5 // pred_check
      _
    $region10: #{vanilla_cnn_forward.2} parent=5 // pred_check_branch
      %116 = sbr.rel (%p113) target = $region12
    $region11: #{vanilla_cnn_forward.2} parent=5 // pred_region
      %s117 = ssub.s32 %s9, 1
      // Predicated region
      $region13: #{vanilla_cnn_forward.2} parent=11 // pred_check
        %p118 = pneg %p56
      $region14: #{vanilla_cnn_forward.2} parent=11 // pred_check_branch
        %120 = sbr.rel (%p118) target = $region16
      $region15: #{vanilla_cnn_forward.2} parent=11 // pred_region
        _
      $region16: #{vanilla_cnn_forward.2} parent=11 // pred_fallthru
        _
      // Predicated region
      $region17: #{vanilla_cnn_forward.2} parent=11 // pred_check
        %p121 = pneg %p77
      $region18: #{vanilla_cnn_forward.2} parent=11 // pred_check_branch
        %123 = sbr.rel (%p121) target = $region20
      $region19: #{vanilla_cnn_forward.2} parent=11 // pred_region
        _
      $region20: #{vanilla_cnn_forward.2} parent=11 // pred_fallthru
        _
    $region12: #{vanilla_cnn_forward.2} parent=5 // pred_fallthru
      _
    %p124 = scmp.lt.s32.totalorder %s9, 2
    // Predicated region
    $region21: #{vanilla_cnn_forward.2} parent=5 // pred_check
      %p125 = pneg %p124
    $region22: #{vanilla_cnn_forward.2} parent=5 // pred_check_branch
      %127 = sbr.rel (%p125) target = $region24
    $region23: #{vanilla_cnn_forward.2} parent=5 // pred_region
      // Predicated region
      $region25: #{vanilla_cnn_forward.2} parent=23 // pred_check
        %p128 = pneg %p29
      $region26: #{vanilla_cnn_forward.2} parent=23 // pred_check_branch
        %130 = sbr.rel (%p128) target = $region28
      $region27: #{vanilla_cnn_forward.2} parent=23 // pred_region
        %s131 = smul.u32 4, %s9
        %p132 = scmp.lt.s32.totalorder %s131, 7
        %s133 = scalar_select %p132, %s131, 7
        %s134 = smul.addr %s133, 44
        %s135 = smul.addr %s134, 4
        %s136 = scalar_lea.vmem %s0, %s135
        %s137 = smul.u32 4, %s9
      $region28: #{vanilla_cnn_forward.2} parent=23 // pred_fallthru
        _
    $region24: #{vanilla_cnn_forward.2} parent=5 // pred_fallthru
      _
    %p138 = scmp.le.s32.totalorder 1, %s9
    %p139 = scmp.lt.s32.totalorder %s9, 3
    %p140 = pnand %p138, %p139
    %p141 = pneg %p140
    // Predicated region
    $region29: #{vanilla_cnn_forward.2} parent=5 // pred_check
      _
    $region30: #{vanilla_cnn_forward.2} parent=5 // pred_check_branch
      %143 = sbr.rel (%p140) target = $region32
    $region31: #{vanilla_cnn_forward.2} parent=5 // pred_region
      %s144 = ssub.s32 %s9, 1
      %s145 = smul.u32 4, %s14
      %p146 = scmp.lt.s32.totalorder %s145, 7
      %s147 = scalar_select %p146, %s145, 7
      %s148 = smul.addr %s147, 44
      %s149 = smul.addr %s148, 4
      %s150 = scalar_lea.vmem %s0, %s149
      %p151 = pneg %p35
      %p152 = pneg %p32
      %p153 = pneg %p56
      %p154 = pneg %p53
      %p155 = pneg %p77
      %p156 = pneg %p74
      %p157 = pneg %p103
      %p158 = pneg %p100
      %p159 = scmp.lt.s32.totalorder %s14, 1
      %s160 = scalar_select %p159, %s14, 1
      %s161 = smul.addr %s160, 22
      %s162 = smul.addr %s161, 4
      %s163 = scalar_lea.vmem %s3, %s162
      %s164 = smul.u32 4, %s14
      %p165 = scmp.lt.s32.totalorder %s164, 7
      %s166 = scalar_select %p165, %s164, 7
      %s167 = smul.addr %s166, 44
      %s168 = smul.addr %s167, 4
      %s169 = scalar_lea.vmem %s0, %s168
      %s170 = smul.u32 4, %s14
      %p171 = scmp.lt.s32.totalorder %s14, 1
      %s172 = scalar_select %p171, %s14, 1
      %s173 = smul.addr %s172, 22
      %s174 = smul.addr %s173, 4
      %s175 = scalar_lea.vmem %s3, %s174
      %v177 = vld [vmem:[%s1] sm:$0xf]
      %v178 = vld [vmem:[%s1 + $0x4] sm:$0xf]
      %v179 = vld [vmem:[%s1 + $0x8] sm:$0xf]
      %v180 = vld [vmem:[%s1 + $0xc] sm:$0xf]
      %v181 = vld [vmem:[%s1 + $0x10] sm:$0xf]
      %v182 = vld [vmem:[%s1 + $0x14] sm:$0xf]
      %v183 = vld [vmem:[%s1 + $0x18] sm:$0xf]
      %v184 = vld [vmem:[%s1 + $0x1c] sm:$0xf]
      %v185 = vld [vmem:[%s1 + $0x20] sm:$0xf]
      %v186 = vld [vmem:[%s1 + $0x24] sm:$0xf]
      %v187 = vld [vmem:[%s1 + $0x28] sm:$0xf]
      %v188 = vld [vmem:[%s1 + $0x2c] sm:$0xf]
      %v189 = vld [vmem:[%s1 + $0x30] sm:$0xf]
      %v190 = vld [vmem:[%s1 + $0x34] sm:$0xf]
      %v191 = vld [vmem:[%s1 + $0x38] sm:$0xf]
      %v192 = vld [vmem:[%s1 + $0x3c] sm:$0xf]
      %v193 = vld [vmem:[%s1 + $0x40] sm:$0xf]
      %v194 = vld [vmem:[%s1 + $0x44] sm:$0xf]
      %v195 = vld [vmem:[%s1 + $0x48] sm:$0x3]
      %v196 = vld [vmem:[%s169] sm:$0xff]
      %v197 = vld [vmem:[%s169 + $0x8] sm:$0xff]
      %v198 = vld [vmem:[%s169 + $0x10] sm:$0xff]
      %v199 = vld [vmem:[%s169 + $0x18] sm:$0xff]
      %v200 = vld [vmem:[%s169 + $0x20] sm:$0xff]
      %v201 = vld [vmem:[%s169 + $0x28] sm:$0xff]
      %v202 = vld [vmem:[%s169 + $0x30] sm:$0xff]
      %v203 = vld [vmem:[%s169 + $0x38] sm:$0xff]
      %v204 = vld [vmem:[%s169 + $0x40] sm:$0xff]
      %v205 = vld [vmem:[%s169 + $0x48] sm:$0xff]
      %v206 = vld [vmem:[%s169 + $0x50] sm:$0xff]
      %v207 = vld [vmem:[%s169 + $0x58] sm:$0xff]
      %v208 = vld [vmem:[%s169 + $0x60] sm:$0xff]
      %v209 = vld [vmem:[%s169 + $0x68] sm:$0xff]
      %v210 = vld [vmem:[%s169 + $0x70] sm:$0xff]
      %v211 = vld [vmem:[%s169 + $0x78] sm:$0xff]
      %v212 = vld [vmem:[%s169 + $0x80] sm:$0xff]
      %v213 = vld [vmem:[%s169 + $0x88] sm:$0xff]
      %v214 = vld [vmem:[%s169 + $0x90] sm:$0xff]
      %v215 = vld [vmem:[%s169 + $0x98] sm:$0xff]
      %v216 = vld [vmem:[%s169 + $0xa0] sm:$0xff]
      %v217 = vld [vmem:[%s169 + $0xa8] sm:$0x11]
      %v240 = vunpack.c.l.b16 %v196
      %v241 = vunpack.c.h.b16 %v196
      %v242 = vunpack.c.l.b16 %v197
      %v243 = vunpack.c.h.b16 %v197
      %v244 = vunpack.c.l.b16 %v198
      %v245 = vunpack.c.h.b16 %v198
      %v246 = vunpack.c.l.b16 %v199
      %v247 = vunpack.c.h.b16 %v199
      %v248 = vunpack.c.l.b16 %v200
      %v249 = vunpack.c.h.b16 %v200
      %v250 = vunpack.c.l.b16 %v201
      %v251 = vunpack.c.h.b16 %v201
      %v252 = vunpack.c.l.b16 %v202
      %v253 = vunpack.c.h.b16 %v202
      %v254 = vunpack.c.l.b16 %v203
      %v255 = vunpack.c.h.b16 %v203
      %v256 = vunpack.c.l.b16 %v204
      %v257 = vunpack.c.h.b16 %v204
      %v258 = vunpack.c.l.b16 %v205
      %v259 = vunpack.c.h.b16 %v205
      %v260 = vunpack.c.l.b16 %v206
      %v261 = vunpack.c.h.b16 %v206
      %v262 = vunpack.c.l.b16 %v207
      %v263 = vunpack.c.h.b16 %v207
      %v264 = vunpack.c.l.b16 %v208
      %v265 = vunpack.c.h.b16 %v208
      %v266 = vunpack.c.l.b16 %v209
      %v267 = vunpack.c.h.b16 %v209
      %v268 = vunpack.c.l.b16 %v210
      %v269 = vunpack.c.h.b16 %v210
      %v270 = vunpack.c.l.b16 %v211
      %v271 = vunpack.c.h.b16 %v211
      %v272 = vunpack.c.l.b16 %v212
      %v273 = vunpack.c.h.b16 %v212
      %v274 = vunpack.c.l.b16 %v213
      %v275 = vunpack.c.h.b16 %v213
      %v276 = vunpack.c.l.b16 %v214
      %v277 = vunpack.c.h.b16 %v214
      %v278 = vunpack.c.l.b16 %v215
      %v279 = vunpack.c.h.b16 %v215
      %v280 = vunpack.c.l.b16 %v216
      %v281 = vunpack.c.h.b16 %v216
      %v282 = vunpack.c.l.b16 %v217
      %v283 = vunpack.c.h.b16 %v217
      %v284 = vpack.c.b16 %v242, %v240
      %v285 = vpack.c.b16 %v243, %v241
      %v286 = vpack.c.b16 %v246, %v244
      %v287 = vpack.c.b16 %v247, %v245
      %v288 = vpack.c.b16 %v250, %v248
      %v289 = vpack.c.b16 %v251, %v249
      %v290 = vpack.c.b16 %v254, %v252
      %v291 = vpack.c.b16 %v255, %v253
      %v292 = vpack.c.b16 %v258, %v256
      %v293 = vpack.c.b16 %v259, %v257
      %v294 = vpack.c.b16 %v262, %v260
      %v295 = vpack.c.b16 %v263, %v261
      %v296 = vpack.c.b16 %v266, %v264
      %v297 = vpack.c.b16 %v267, %v265
      %v298 = vpack.c.b16 %v270, %v268
      %v299 = vpack.c.b16 %v271, %v269
      %v300 = vpack.c.b16 %v274, %v272
      %v301 = vpack.c.b16 %v275, %v273
      %v302 = vpack.c.b16 %v278, %v276
      %v303 = vpack.c.b16 %v279, %v277
      %v304 = vpack.c.b16 %v282, %v280
      %v305 = vpack.c.b16 %v283, %v281
      %v336 = vunpack.c.l.b16 %v177
      %v337 = vunpack.c.l.b16 %v178
      %v338 = vunpack.c.l.b16 %v179
      %v339 = vunpack.c.l.b16 %v180
      %v340 = vunpack.c.l.b16 %v181
      %v341 = vunpack.c.l.b16 %v182
      %v342 = vunpack.c.l.b16 %v183
      %v343 = vunpack.c.l.b16 %v184
      %v344 = vunpack.c.l.b16 %v185
      %v345 = vunpack.c.l.b16 %v186
      %v346 = vunpack.c.l.b16 %v187
      %v347 = vunpack.c.l.b16 %v188
      %v348 = vunpack.c.l.b16 %v189
      %v349 = vunpack.c.l.b16 %v190
      %v350 = vunpack.c.l.b16 %v191
      %v351 = vunpack.c.l.b16 %v192
      %v352 = vunpack.c.l.b16 %v193
      %v353 = vunpack.c.l.b16 %v194
      %v354 = vunpack.c.l.b16 %v195
      %v355 = vpack.c.b16 %v337, %v336
      %v356 = vpack.c.b16 %v339, %v338
      %v357 = vpack.c.b16 %v341, %v340
      %v358 = vpack.c.b16 %v343, %v342
      %v359 = vpack.c.b16 %v345, %v344
      %v360 = vpack.c.b16 %v347, %v346
      %v361 = vpack.c.b16 %v349, %v348
      %v362 = vpack.c.b16 %v351, %v350
      %v363 = vpack.c.b16 %v353, %v352
      %v364 = vpack.c.b16 %v354, %v354
      %vm374 = vcmask 154624
      %v376 = vsel %vm374, %v285, 0
      %v379 = vsel %vm374, %v287, 0
      %v382 = vsel %vm374, %v289, 0
      %v385 = vsel %vm374, %v291, 0
      %v388 = vsel %vm374, %v293, 0
      %v391 = vsel %vm374, %v295, 0
      %v394 = vsel %vm374, %v297, 0
      %v397 = vsel %vm374, %v299, 0
      %v400 = vsel %vm374, %v301, 0
      %v403 = vsel %vm374, %v303, 0
      %v406 = vsel %vm374, %v305, 0
      %vm408 = vcmask 1040384
      %vm409 = vcmask 1041408
      %v410 = vsel %vm408, 4294967295, 65535
      %v411 = vsel %vm409, %v410, 0
      %v413 = vand.u32 %v364, %v411
      %415 = vmatprep.subr.bf16.mxu0 0
      %416 = vmatpush1.bf16.msra.mxu0 %v355
      %417 = vmatprep.subr.bf16.mxu0 0
      %418 = vmatpush1.bf16.msra.mxu0 %v356
      %419 = vmatprep.subr.bf16.mxu0 0
      %420 = vmatpush1.bf16.msra.mxu0 %v357
      %421 = vmatprep.subr.bf16.mxu0 0
      %422 = vmatpush1.bf16.msra.mxu0 %v358
      %423 = vmatprep.subr.bf16.mxu0 0
      %424 = vmatpush1.bf16.msra.mxu0 %v359
      %425 = vmatprep.subr.bf16.mxu0 0
      %426 = vmatpush1.bf16.msra.mxu0 %v360
      %427 = vmatprep.subr.bf16.mxu0 0
      %428 = vmatpush1.bf16.msra.mxu0 %v361
      %429 = vmatprep.subr.bf16.mxu0 0
      %430 = vmatpush1.bf16.msra.mxu0 %v362
      %431 = vmatprep.subr.bf16.mxu0 0
      %432 = vmatpush1.bf16.msra.mxu0 %v363
      %433 = vmatprep.subr.bf16.mxu0 0
      %434 = vmatpush1.bf16.msra.mxu0 %v413
      %435 = vmatprep.subr.bf16.mxu0 0
      %436 = vmatpush1.bf16.msra.mxu0 0
      %437 = vmatprep.subr.bf16.mxu0 0
      %438 = vmatpush1.bf16.msra.mxu0 0
      %439 = vmatprep.subr.bf16.mxu0 0
      %440 = vmatpush1.bf16.msra.mxu0 0
      %441 = vmatprep.subr.bf16.mxu0 0
      %442 = vmatpush1.bf16.msra.mxu0 0
      %443 = vmatprep.subr.bf16.mxu0 0
      %444 = vmatpush1.bf16.msra.mxu0 0
      %445 = vmatprep.subr.bf16.mxu0 0
      %446 = vmatpush1.bf16.msra.mxu0 0
      %447 = vmatprep.mubr.bf16.mxu0 %v376
      %448 = vmatmul.mubr.bf16.gmra.mrb[0].mxu0 %v284
      %v449 = vpop.f32.mrb[0].mxu0
      %v450 = vadd.f32 0.0, %v449
      %v451 = vpop.f32.mrb[0].mxu0
      %v452 = vpop.f32.mrb[0].mxu0
      %v453 = vadd.f32 0.0, %v452
      %v454 = vpop.f32.mrb[0].mxu0
      %455 = vmatprep.mubr.bf16.mxu0 %v379
      %456 = vmatmul.mubr.bf16.gmra.mrb[0].mxu0 %v286
      %v457 = vpop.f32.mrb[0].mxu0
      %v458 = vadd.f32 0.0, %v457
      %v459 = vpop.f32.mrb[0].mxu0
      %v460 = vpop.f32.mrb[0].mxu0
      %v461 = vadd.f32 0.0, %v460
      %v462 = vpop.f32.mrb[0].mxu0
      %463 = vmatprep.mubr.bf16.mxu0 %v382
      %464 = vmatmul.mubr.bf16.gmra.mrb[0].mxu0 %v288
      %v465 = vpop.f32.mrb[0].mxu0
      %v466 = vadd.f32 0.0, %v465
      %v467 = vpop.f32.mrb[0].mxu0
      %v468 = vpop.f32.mrb[0].mxu0
      %v469 = vadd.f32 0.0, %v468
      %v470 = vpop.f32.mrb[0].mxu0
      %471 = vmatprep.mubr.bf16.mxu0 %v385
      %472 = vmatmul.mubr.bf16.gmra.mrb[0].mxu0 %v290
      %v473 = vpop.f32.mrb[0].mxu0
      %v474 = vadd.f32 0.0, %v473
      %v475 = vpop.f32.mrb[0].mxu0
      %v476 = vpop.f32.mrb[0].mxu0
      %v477 = vadd.f32 0.0, %v476
      %v478 = vpop.f32.mrb[0].mxu0
      %479 = vmatprep.mubr.bf16.mxu0 %v388
      %480 = vmatmul.mubr.bf16.gmra.mrb[0].mxu0 %v292
      %v481 = vpop.f32.mrb[0].mxu0
      %v482 = vadd.f32 0.0, %v481
      %v483 = vpop.f32.mrb[0].mxu0
      %v484 = vpop.f32.mrb[0].mxu0
      %v485 = vadd.f32 0.0, %v484
      %v486 = vpop.f32.mrb[0].mxu0
      %487 = vmatprep.mubr.bf16.mxu0 %v391
      %488 = vmatmul.mubr.bf16.gmra.mrb[0].mxu0 %v294
      %v489 = vpop.f32.mrb[0].mxu0
      %v490 = vadd.f32 0.0, %v489
      %v491 = vpop.f32.mrb[0].mxu0
      %v492 = vpop.f32.mrb[0].mxu0
      %v493 = vadd.f32 0.0, %v492
      %v494 = vpop.f32.mrb[0].mxu0
      %495 = vmatprep.mubr.bf16.mxu0 %v394
      %496 = vmatmul.mubr.bf16.gmra.mrb[0].mxu0 %v296
      %v497 = vpop.f32.mrb[0].mxu0
      %v498 = vadd.f32 0.0, %v497
      %v499 = vpop.f32.mrb[0].mxu0
      %v500 = vpop.f32.mrb[0].mxu0
      %v501 = vadd.f32 0.0, %v500
      %v502 = vpop.f32.mrb[0].mxu0
      %503 = vmatprep.mubr.bf16.mxu0 %v397
      %504 = vmatmul.mubr.bf16.gmra.mrb[0].mxu0 %v298
      %v505 = vpop.f32.mrb[0].mxu0
      %v506 = vadd.f32 0.0, %v505
      %v507 = vpop.f32.mrb[0].mxu0
      %v508 = vpop.f32.mrb[0].mxu0
      %v509 = vadd.f32 0.0, %v508
      %v510 = vpop.f32.mrb[0].mxu0
      %511 = vmatprep.mubr.bf16.mxu0 %v400
      %512 = vmatmul.mubr.bf16.gmra.mrb[0].mxu0 %v300
      %v513 = vpop.f32.mrb[0].mxu0
      %v514 = vadd.f32 0.0, %v513
      %v515 = vpop.f32.mrb[0].mxu0
      %v516 = vpop.f32.mrb[0].mxu0
      %v517 = vadd.f32 0.0, %v516
      %v518 = vpop.f32.mrb[0].mxu0
      %519 = vmatprep.mubr.bf16.mxu0 %v403
      %520 = vmatmul.mubr.bf16.gmra.mrb[0].mxu0 %v302
      %v521 = vpop.f32.mrb[0].mxu0
      %v522 = vadd.f32 0.0, %v521
      %v523 = vpop.f32.mrb[0].mxu0
      %v524 = vpop.f32.mrb[0].mxu0
      %v525 = vadd.f32 0.0, %v524
      %v526 = vpop.f32.mrb[0].mxu0
      %527 = vmatprep.mubr.bf16.mxu0 %v406
      %528 = vmatmul.mubr.bf16.gmra.mrb[0].mxu0 %v304
      %v529 = vpop.f32.mrb[0].mxu0
      %v530 = vadd.f32 0.0, %v529
      %v531 = vpop.f32.mrb[0].mxu0
      %v532 = vpop.f32.mrb[0].mxu0
      %v533 = vadd.f32 0.0, %v532
      %v534 = vpop.f32.mrb[0].mxu0
      %535 = vdwg.mxu0
      %s536 = scalar_lea.vmem %s169, 176
      %v537 = vld [vmem:[%s536] sm:$0xff]
      %v538 = vld [vmem:[%s536 + $0x8] sm:$0xff]
      %v539 = vld [vmem:[%s536 + $0x10] sm:$0xff]
      %v540 = vld [vmem:[%s536 + $0x18] sm:$0xff]
      %v541 = vld [vmem:[%s536 + $0x20] sm:$0xff]
      %v542 = vld [vmem:[%s536 + $0x28] sm:$0xff]
      %v543 = vld [vmem:[%s536 + $0x30] sm:$0xff]
      %v544 = vld [vmem:[%s536 + $0x38] sm:$0xff]
      %v545 = vld [vmem:[%s536 + $0x40] sm:$0xff]
      %v546 = vld [vmem:[%s536 + $0x48] sm:$0xff]
      %v547 = vld [vmem:[%s536 + $0x50] sm:$0xff]
      %v548 = vld [vmem:[%s536 + $0x58] sm:$0xff]
      %v549 = vld [vmem:[%s536 + $0x60] sm:$0xff]
      %v550 = vld [vmem:[%s536 + $0x68] sm:$0xff]
      %v551 = vld [vmem:[%s536 + $0x70] sm:$0xff]
      %v552 = vld [vmem:[%s536 + $0x78] sm:$0xff]
      %v553 = vld [vmem:[%s536 + $0x80] sm:$0xff]
      %v554 = vld [vmem:[%s536 + $0x88] sm:$0xff]
      %v555 = vld [vmem:[%s536 + $0x90] sm:$0xff]
      %v556 = vld [vmem:[%s536 + $0x98] sm:$0xff]
      %v557 = vld [vmem:[%s536 + $0xa0] sm:$0xff]
      %v558 = vld [vmem:[%s536 + $0xa8] sm:$0x11]
      %v581 = vunpack.c.l.b16 %v537
      %v582 = vunpack.c.h.b16 %v537
      %v583 = vunpack.c.l.b16 %v538
      %v584 = vunpack.c.h.b16 %v538
      %v585 = vunpack.c.l.b16 %v539
      %v586 = vunpack.c.h.b16 %v539
      %v587 = vunpack.c.l.b16 %v540
      %v588 = vunpack.c.h.b16 %v540
      %v589 = vunpack.c.l.b16 %v541
      %v590 = vunpack.c.h.b16 %v541
      %v591 = vunpack.c.l.b16 %v542
      %v592 = vunpack.c.h.b16 %v542
      %v593 = vunpack.c.l.b16 %v543
      %v594 = vunpack.c.h.b16 %v543
      %v595 = vunpack.c.l.b16 %v544
      %v596 = vunpack.c.h.b16 %v544
      %v597 = vunpack.c.l.b16 %v545
      %v598 = vunpack.c.h.b16 %v545
      %v599 = vunpack.c.l.b16 %v546
      %v600 = vunpack.c.h.b16 %v546
      %v601 = vunpack.c.l.b16 %v547
      %v602 = vunpack.c.h.b16 %v547
      %v603 = vunpack.c.l.b16 %v548
      %v604 = vunpack.c.h.b16 %v548
      %v605 = vunpack.c.l.b16 %v549
      %v606 = vunpack.c.h.b16 %v549
      %v607 = vunpack.c.l.b16 %v550
      %v608 = vunpack.c.h.b16 %v550
      %v609 = vunpack.c.l.b16 %v551
      %v610 = vunpack.c.h.b16 %v551
      %v611 = vunpack.c.l.b16 %v552
      %v612 = vunpack.c.h.b16 %v552
      %v613 = vunpack.c.l.b16 %v553
      %v614 = vunpack.c.h.b16 %v553
      %v615 = vunpack.c.l.b16 %v554
      %v616 = vunpack.c.h.b16 %v554
      %v617 = vunpack.c.l.b16 %v555
      %v618 = vunpack.c.h.b16 %v555
      %v619 = vunpack.c.l.b16 %v556
      %v620 = vunpack.c.h.b16 %v556
      %v621 = vunpack.c.l.b16 %v557
      %v622 = vunpack.c.h.b16 %v557
      %v623 = vunpack.c.l.b16 %v558
      %v624 = vunpack.c.h.b16 %v558
      %v625 = vpack.c.b16 %v583, %v581
      %v626 = vpack.c.b16 %v584, %v582
      %v627 = vpack.c.b16 %v587, %v585
      %v628 = vpack.c.b16 %v588, %v586
      %v629 = vpack.c.b16 %v591, %v589
      %v630 = vpack.c.b16 %v592, %v590
      %v631 = vpack.c.b16 %v595, %v593
      %v632 = vpack.c.b16 %v596, %v594
      %v633 = vpack.c.b16 %v599, %v597
      %v634 = vpack.c.b16 %v600, %v598
      %v635 = vpack.c.b16 %v603, %v601
      %v636 = vpack.c.b16 %v604, %v602
      %v637 = vpack.c.b16 %v607, %v605
      %v638 = vpack.c.b16 %v608, %v606
      %v639 = vpack.c.b16 %v611, %v609
      %v640 = vpack.c.b16 %v612, %v610
      %v641 = vpack.c.b16 %v615, %v613
      %v642 = vpack.c.b16 %v616, %v614
      %v643 = vpack.c.b16 %v619, %v617
      %v644 = vpack.c.b16 %v620, %v618
      %v645 = vpack.c.b16 %v623, %v621
      %v646 = vpack.c.b16 %v624, %v622
      %v659 = vsel %vm374, %v626, 0
      %v662 = vsel %vm374, %v628, 0
      %v665 = vsel %vm374, %v630, 0
      %v668 = vsel %vm374, %v632, 0
      %v671 = vsel %vm374, %v634, 0
      %v674 = vsel %vm374, %v636, 0
      %v677 = vsel %vm374, %v638, 0
      %v680 = vsel %vm374, %v640, 0
      %v683 = vsel %vm374, %v642, 0
      %v686 = vsel %vm374, %v644, 0
      %v689 = vsel %vm374, %v646, 0
      %691 = vmatprep.subr.bf16.mxu0 0
      %692 = vmatpush1.bf16.msra.mxu0 %v355
      %693 = vmatprep.subr.bf16.mxu0 0
      %694 = vmatpush1.bf16.msra.mxu0 %v356
      %695 = vmatprep.subr.bf16.mxu0 0
      %696 = vmatpush1.bf16.msra.mxu0 %v357
      %697 = vmatprep.subr.bf16.mxu0 0
      %698 = vmatpush1.bf16.msra.mxu0 %v358
      %699 = vmatprep.subr.bf16.mxu0 0
      %700 = vmatpush1.bf16.msra.mxu0 %v359
      %701 = vmatprep.subr.bf16.mxu0 0
      %702 = vmatpush1.bf16.msra.mxu0 %v360
      %703 = vmatprep.subr.bf16.mxu0 0
      %704 = vmatpush1.bf16.msra.mxu0 %v361
      %705 = vmatprep.subr.bf16.mxu0 0
      %706 = vmatpush1.bf16.msra.mxu0 %v362
      %707 = vmatprep.subr.bf16.mxu0 0
      %708 = vmatpush1.bf16.msra.mxu0 %v363
      %709 = vmatprep.subr.bf16.mxu0 0
      %710 = vmatpush1.bf16.msra.mxu0 %v413
      %711 = vmatprep.subr.bf16.mxu0 0
      %712 = vmatpush1.bf16.msra.mxu0 0
      %713 = vmatprep.subr.bf16.mxu0 0
      %714 = vmatpush1.bf16.msra.mxu0 0
      %715 = vmatprep.subr.bf16.mxu0 0
      %716 = vmatpush1.bf16.msra.mxu0 0
      %717 = vmatprep.subr.bf16.mxu0 0
      %718 = vmatpush1.bf16.msra.mxu0 0
      %719 = vmatprep.subr.bf16.mxu0 0
      %720 = vmatpush1.bf16.msra.mxu0 0
      %721 = vmatprep.subr.bf16.mxu0 0
      %722 = vmatpush1.bf16.msra.mxu0 0
      %723 = vmatprep.mubr.bf16.mxu0 %v659
      %724 = vmatmul.mubr.bf16.gmra.mrb[0].mxu0 %v625
      %v725 = vpop.f32.mrb[0].mxu0
      %v726 = vadd.f32 0.0, %v725
      %v727 = vpop.f32.mrb[0].mxu0
      %v728 = vpop.f32.mrb[0].mxu0
      %v729 = vadd.f32 0.0, %v728
      %v730 = vpop.f32.mrb[0].mxu0
      %731 = vmatprep.mubr.bf16.mxu0 %v662
      %732 = vmatmul.mubr.bf16.gmra.mrb[0].mxu0 %v627
      %v733 = vpop.f32.mrb[0].mxu0
      %v734 = vadd.f32 0.0, %v733
      %v735 = vpop.f32.mrb[0].mxu0
      %v736 = vpop.f32.mrb[0].mxu0
      %v737 = vadd.f32 0.0, %v736
      %v738 = vpop.f32.mrb[0].mxu0
      %739 = vmatprep.mubr.bf16.mxu0 %v665
      %740 = vmatmul.mubr.bf16.gmra.mrb[0].mxu0 %v629
      %v741 = vpop.f32.mrb[0].mxu0
      %v742 = vadd.f32 0.0, %v741
      %v743 = vpop.f32.mrb[0].mxu0
      %v744 = vpop.f32.mrb[0].mxu0
      %v745 = vadd.f32 0.0, %v744
      %v746 = vpop.f32.mrb[0].mxu0
      %747 = vmatprep.mubr.bf16.mxu0 %v668
      %748 = vmatmul.mubr.bf16.gmra.mrb[0].mxu0 %v631
      %v749 = vpop.f32.mrb[0].mxu0
      %v750 = vadd.f32 0.0, %v749
      %v751 = vpop.f32.mrb[0].mxu0
      %v752 = vpop.f32.mrb[0].mxu0
      %v753 = vadd.f32 0.0, %v752
      %v754 = vpop.f32.mrb[0].mxu0
      %755 = vmatprep.mubr.bf16.mxu0 %v671
      %756 = vmatmul.mubr.bf16.gmra.mrb[0].mxu0 %v633
      %v757 = vpop.f32.mrb[0].mxu0
      %v758 = vadd.f32 0.0, %v757
      %v759 = vpop.f32.mrb[0].mxu0
      %v760 = vpop.f32.mrb[0].mxu0
      %v761 = vadd.f32 0.0, %v760
      %v762 = vpop.f32.mrb[0].mxu0
      %763 = vmatprep.mubr.bf16.mxu0 %v674
      %764 = vmatmul.mubr.bf16.gmra.mrb[0].mxu0 %v635
      %v765 = vpop.f32.mrb[0].mxu0
      %v766 = vadd.f32 0.0, %v765
      %v767 = vpop.f32.mrb[0].mxu0
      %v768 = vpop.f32.mrb[0].mxu0
      %v769 = vadd.f32 0.0, %v768
      %v770 = vpop.f32.mrb[0].mxu0
      %771 = vmatprep.mubr.bf16.mxu0 %v677
      %772 = vmatmul.mubr.bf16.gmra.mrb[0].mxu0 %v637
      %v773 = vpop.f32.mrb[0].mxu0
      %v774 = vadd.f32 0.0, %v773
      %v775 = vpop.f32.mrb[0].mxu0
      %v776 = vpop.f32.mrb[0].mxu0
      %v777 = vadd.f32 0.0, %v776
      %v778 = vpop.f32.mrb[0].mxu0
      %779 = vmatprep.mubr.bf16.mxu0 %v680
      %780 = vmatmul.mubr.bf16.gmra.mrb[0].mxu0 %v639
      %v781 = vpop.f32.mrb[0].mxu0
      %v782 = vadd.f32 0.0, %v781
      %v783 = vpop.f32.mrb[0].mxu0
      %v784 = vpop.f32.mrb[0].mxu0
      %v785 = vadd.f32 0.0, %v784
      %v786 = vpop.f32.mrb[0].mxu0
      %787 = vmatprep.mubr.bf16.mxu0 %v683
      %788 = vmatmul.mubr.bf16.gmra.mrb[0].mxu0 %v641
      %v789 = vpop.f32.mrb[0].mxu0
      %v790 = vadd.f32 0.0, %v789
      %v791 = vpop.f32.mrb[0].mxu0
      %v792 = vpop.f32.mrb[0].mxu0
      %v793 = vadd.f32 0.0, %v792
      %v794 = vpop.f32.mrb[0].mxu0
      %795 = vmatprep.mubr.bf16.mxu0 %v686
      %796 = vmatmul.mubr.bf16.gmra.mrb[0].mxu0 %v643
      %v797 = vpop.f32.mrb[0].mxu0
      %v798 = vadd.f32 0.0, %v797
      %v799 = vpop.f32.mrb[0].mxu0
      %v800 = vpop.f32.mrb[0].mxu0
      %v801 = vadd.f32 0.0, %v800
      %v802 = vpop.f32.mrb[0].mxu0
      %803 = vmatprep.mubr.bf16.mxu0 %v689
      %804 = vmatmul.mubr.bf16.gmra.mrb[0].mxu0 %v645
      %v805 = vpop.f32.mrb[0].mxu0
      %v806 = vadd.f32 0.0, %v805
      %v807 = vpop.f32.mrb[0].mxu0
      %v808 = vpop.f32.mrb[0].mxu0
      %v809 = vadd.f32 0.0, %v808
      %v810 = vpop.f32.mrb[0].mxu0
      %811 = vdwg.mxu0
      %s812 = scalar_lea.vmem %s169, 352
      %v813 = vld [vmem:[%s812] sm:$0xff]
      %v814 = vld [vmem:[%s812 + $0x8] sm:$0xff]
      %v815 = vld [vmem:[%s812 + $0x10] sm:$0xff]
      %v816 = vld [vmem:[%s812 + $0x18] sm:$0xff]
      %v817 = vld [vmem:[%s812 + $0x20] sm:$0xff]
      %v818 = vld [vmem:[%s812 + $0x28] sm:$0xff]
      %v819 = vld [vmem:[%s812 + $0x30] sm:$0xff]
      %v820 = vld [vmem:[%s812 + $0x38] sm:$0xff]
      %v821 = vld [vmem:[%s812 + $0x40] sm:$0xff]
      %v822 = vld [vmem:[%s812 + $0x48] sm:$0xff]
      %v823 = vld [vmem:[%s812 + $0x50] sm:$0xff]
      %v824 = vld [vmem:[%s812 + $0x58] sm:$0xff]
      %v825 = vld [vmem:[%s812 + $0x60] sm:$0xff]
      %v826 = vld [vmem:[%s812 + $0x68] sm:$0xff]
      %v827 = vld [vmem:[%s812 + $0x70] sm:$0xff]
      %v828 = vld [vmem:[%s812 + $0x78] sm:$0xff]
      %v829 = vld [vmem:[%s812 + $0x80] sm:$0xff]
      %v830 = vld [vmem:[%s812 + $0x88] sm:$0xff]
      %v831 = vld [vmem:[%s812 + $0x90] sm:$0xff]
      %v832 = vld [vmem:[%s812 + $0x98] sm:$0xff]
      %v833 = vld [vmem:[%s812 + $0xa0] sm:$0xff]
      %v834 = vld [vmem:[%s812 + $0xa8] sm:$0x11]
      %v857 = vunpack.c.l.b16 %v813
      %v858 = vunpack.c.h.b16 %v813
      %v859 = vunpack.c.l.b16 %v814
      %v860 = vunpack.c.h.b16 %v814
      %v861 = vunpack.c.l.b16 %v815
      %v862 = vunpack.c.h.b16 %v815
      %v863 = vunpack.c.l.b16 %v816
      %v864 = vunpack.c.h.b16 %v816
      %v865 = vunpack.c.l.b16 %v817
      %v866 = vunpack.c.h.b16 %v817
      %v867 = vunpack.c.l.b16 %v818
      %v868 = vunpack.c.h.b16 %v818
      %v869 = vunpack.c.l.b16 %v819
      %v870 = vunpack.c.h.b16 %v819
      %v871 = vunpack.c.l.b16 %v820
      %v872 = vunpack.c.h.b16 %v820
      %v873 = vunpack.c.l.b16 %v821
      %v874 = vunpack.c.h.b16 %v821
      %v875 = vunpack.c.l.b16 %v822
      %v876 = vunpack.c.h.b16 %v822
      %v877 = vunpack.c.l.b16 %v823
      %v878 = vunpack.c.h.b16 %v823
      %v879 = vunpack.c.l.b16 %v824
      %v880 = vunpack.c.h.b16 %v824
      %v881 = vunpack.c.l.b16 %v825
      %v882 = vunpack.c.h.b16 %v825
      %v883 = vunpack.c.l.b16 %v826
      %v884 = vunpack.c.h.b16 %v826
      %v885 = vunpack.c.l.b16 %v827
      %v886 = vunpack.c.h.b16 %v827
      %v887 = vunpack.c.l.b16 %v828
      %v888 = vunpack.c.h.b16 %v828
      %v889 = vunpack.c.l.b16 %v829
      %v890 = vunpack.c.h.b16 %v829
      %v891 = vunpack.c.l.b16 %v830
      %v892 = vunpack.c.h.b16 %v830
      %v893 = vunpack.c.l.b16 %v831
      %v894 = vunpack.c.h.b16 %v831
      %v895 = vunpack.c.l.b16 %v832
      %v896 = vunpack.c.h.b16 %v832
      %v897 = vunpack.c.l.b16 %v833
      %v898 = vunpack.c.h.b16 %v833
      %v899 = vunpack.c.l.b16 %v834
      %v900 = vunpack.c.h.b16 %v834
      %v901 = vpack.c.b16 %v859, %v857
      %v902 = vpack.c.b16 %v860, %v858
      %v903 = vpack.c.b16 %v863, %v861
      %v904 = vpack.c.b16 %v864, %v862
      %v905 = vpack.c.b16 %v867, %v865
      %v906 = vpack.c.b16 %v868, %v866
      %v907 = vpack.c.b16 %v871, %v869
      %v908 = vpack.c.b16 %v872, %v870
      %v909 = vpack.c.b16 %v875, %v873
      %v910 = vpack.c.b16 %v876, %v874
      %v911 = vpack.c.b16 %v879, %v877
      %v912 = vpack.c.b16 %v880, %v878
      %v913 = vpack.c.b16 %v883, %v881
      %v914 = vpack.c.b16 %v884, %v882
      %v915 = vpack.c.b16 %v887, %v885
      %v916 = vpack.c.b16 %v888, %v886
      %v917 = vpack.c.b16 %v891, %v889
      %v918 = vpack.c.b16 %v892, %v890
      %v919 = vpack.c.b16 %v895, %v893
      %v920 = vpack.c.b16 %v896, %v894
      %v921 = vpack.c.b16 %v899, %v897
      %v922 = vpack.c.b16 %v900, %v898
      %v935 = vsel %vm374, %v902, 0
      %v938 = vsel %vm374, %v904, 0
      %v941 = vsel %vm374, %v906, 0
      %v944 = vsel %vm374, %v908, 0
      %v947 = vsel %vm374, %v910, 0
      %v950 = vsel %vm374, %v912, 0
      %v953 = vsel %vm374, %v914, 0
      %v956 = vsel %vm374, %v916, 0
      %v959 = vsel %vm374, %v918, 0
      %v962 = vsel %vm374, %v920, 0
      %v965 = vsel %vm374, %v922, 0
      %967 = vmatprep.subr.bf16.mxu0 0
      %968 = vmatpush1.bf16.msra.mxu0 %v355
      %969 = vmatprep.subr.bf16.mxu0 0
      %970 = vmatpush1.bf16.msra.mxu0 %v356
      %971 = vmatprep.subr.bf16.mxu0 0
      %972 = vmatpush1.bf16.msra.mxu0 %v357
      %973 = vmatprep.subr.bf16.mxu0 0
      %974 = vmatpush1.bf16.msra.mxu0 %v358
      %975 = vmatprep.subr.bf16.mxu0 0
      %976 = vmatpush1.bf16.msra.mxu0 %v359
      %977 = vmatprep.subr.bf16.mxu0 0
      %978 = vmatpush1.bf16.msra.mxu0 %v360
      %979 = vmatprep.subr.bf16.mxu0 0
      %980 = vmatpush1.bf16.msra.mxu0 %v361
      %981 = vmatprep.subr.bf16.mxu0 0
      %982 = vmatpush1.bf16.msra.mxu0 %v362
      %983 = vmatprep.subr.bf16.mxu0 0
      %984 = vmatpush1.bf16.msra.mxu0 %v363
      %985 = vmatprep.subr.bf16.mxu0 0
      %986 = vmatpush1.bf16.msra.mxu0 %v413
      %987 = vmatprep.subr.bf16.mxu0 0
      %988 = vmatpush1.bf16.msra.mxu0 0
      %989 = vmatprep.subr.bf16.mxu0 0
      %990 = vmatpush1.bf16.msra.mxu0 0
      %991 = vmatprep.subr.bf16.mxu0 0
      %992 = vmatpush1.bf16.msra.mxu0 0
      %993 = vmatprep.subr.bf16.mxu0 0
      %994 = vmatpush1.bf16.msra.mxu0 0
      %995 = vmatprep.subr.bf16.mxu0 0
      %996 = vmatpush1.bf16.msra.mxu0 0
      %997 = vmatprep.subr.bf16.mxu0 0
      %998 = vmatpush1.bf16.msra.mxu0 0
      %999 = vmatprep.mubr.bf16.mxu0 %v935
      %1000 = vmatmul.mubr.bf16.gmra.mrb[0].mxu0 %v901
      %v1001 = vpop.f32.mrb[0].mxu0
      %v1002 = vadd.f32 0.0, %v1001
      %v1003 = vpop.f32.mrb[0].mxu0
      %v1004 = vpop.f32.mrb[0].mxu0
      %v1005 = vadd.f32 0.0, %v1004
      %v1006 = vpop.f32.mrb[0].mxu0
      %1007 = vmatprep.mubr.bf16.mxu0 %v938
      %1008 = vmatmul.mubr.bf16.gmra.mrb[0].mxu0 %v903
      %v1009 = vpop.f32.mrb[0].mxu0
      %v1010 = vadd.f32 0.0, %v1009
      %v1011 = vpop.f32.mrb[0].mxu0
      %v1012 = vpop.f32.mrb[0].mxu0
      %v1013 = vadd.f32 0.0, %v1012
      %v1014 = vpop.f32.mrb[0].mxu0
      %1015 = vmatprep.mubr.bf16.mxu0 %v941
      %1016 = vmatmul.mubr.bf16.gmra.mrb[0].mxu0 %v905
      %v1017 = vpop.f32.mrb[0].mxu0
      %v1018 = vadd.f32 0.0, %v1017
      %v1019 = vpop.f32.mrb[0].mxu0
      %v1020 = vpop.f32.mrb[0].mxu0
      %v1021 = vadd.f32 0.0, %v1020
      %v1022 = vpop.f32.mrb[0].mxu0
      %1023 = vmatprep.mubr.bf16.mxu0 %v944
      %1024 = vmatmul.mubr.bf16.gmra.mrb[0].mxu0 %v907
      %v1025 = vpop.f32.mrb[0].mxu0
      %v1026 = vadd.f32 0.0, %v1025
      %v1027 = vpop.f32.mrb[0].mxu0
      %v1028 = vpop.f32.mrb[0].mxu0
      %v1029 = vadd.f32 0.0, %v1028
      %v1030 = vpop.f32.mrb[0].mxu0
      %1031 = vmatprep.mubr.bf16.mxu0 %v947
      %1032 = vmatmul.mubr.bf16.gmra.mrb[0].mxu0 %v909
      %v1033 = vpop.f32.mrb[0].mxu0
      %v1034 = vadd.f32 0.0, %v1033
      %v1035 = vpop.f32.mrb[0].mxu0
      %v1036 = vpop.f32.mrb[0].mxu0
      %v1037 = vadd.f32 0.0, %v1036
      %v1038 = vpop.f32.mrb[0].mxu0
      %1039 = vmatprep.mubr.bf16.mxu0 %v950
      %1040 = vmatmul.mubr.bf16.gmra.mrb[0].mxu0 %v911
      %v1041 = vpop.f32.mrb[0].mxu0
      %v1042 = vadd.f32 0.0, %v1041
      %v1043 = vpop.f32.mrb[0].mxu0
      %v1044 = vpop.f32.mrb[0].mxu0
      %v1045 = vadd.f32 0.0, %v1044
      %v1046 = vpop.f32.mrb[0].mxu0
      %1047 = vmatprep.mubr.bf16.mxu0 %v953
      %1048 = vmatmul.mubr.bf16.gmra.mrb[0].mxu0 %v913
      %v1049 = vpop.f32.mrb[0].mxu0
      %v1050 = vadd.f32 0.0, %v1049
      %v1051 = vpop.f32.mrb[0].mxu0
      %v1052 = vpop.f32.mrb[0].mxu0
      %v1053 = vadd.f32 0.0, %v1052
      %v1054 = vpop.f32.mrb[0].mxu0
      %1055 = vmatprep.mubr.bf16.mxu0 %v956
      %1056 = vmatmul.mubr.bf16.gmra.mrb[0].mxu0 %v915
      %v1057 = vpop.f32.mrb[0].mxu0
      %v1058 = vadd.f32 0.0, %v1057
      %v1059 = vpop.f32.mrb[0].mxu0
      %v1060 = vpop.f32.mrb[0].mxu0
      %v1061 = vadd.f32 0.0, %v1060
      %v1062 = vpop.f32.mrb[0].mxu0
      %1063 = vmatprep.mubr.bf16.mxu0 %v959
      %1064 = vmatmul.mubr.bf16.gmra.mrb[0].mxu0 %v917
      %v1065 = vpop.f32.mrb[0].mxu0
      %v1066 = vadd.f32 0.0, %v1065
      %v1067 = vpop.f32.mrb[0].mxu0
      %v1068 = vpop.f32.mrb[0].mxu0
      %v1069 = vadd.f32 0.0, %v1068
      %v1070 = vpop.f32.mrb[0].mxu0
      %1071 = vmatprep.mubr.bf16.mxu0 %v962
      %1072 = vmatmul.mubr.bf16.gmra.mrb[0].mxu0 %v919
      %v1073 = vpop.f32.mrb[0].mxu0
      %v1074 = vadd.f32 0.0, %v1073
      %v1075 = vpop.f32.mrb[0].mxu0
      %v1076 = vpop.f32.mrb[0].mxu0
      %v1077 = vadd.f32 0.0, %v1076
      %v1078 = vpop.f32.mrb[0].mxu0
      %1079 = vmatprep.mubr.bf16.mxu0 %v965
      %1080 = vmatmul.mubr.bf16.gmra.mrb[0].mxu0 %v921
      %v1081 = vpop.f32.mrb[0].mxu0
      %v1082 = vadd.f32 0.0, %v1081
      %v1083 = vpop.f32.mrb[0].mxu0
      %v1084 = vpop.f32.mrb[0].mxu0
      %v1085 = vadd.f32 0.0, %v1084
      %v1086 = vpop.f32.mrb[0].mxu0
      %1087 = vdwg.mxu0
      %s1088 = scalar_lea.vmem %s169, 528
      %v1089 = vld [vmem:[%s1088] sm:$0xff]
      %v1090 = vld [vmem:[%s1088 + $0x8] sm:$0xff]
      %v1091 = vld [vmem:[%s1088 + $0x10] sm:$0xff]
      %v1092 = vld [vmem:[%s1088 + $0x18] sm:$0xff]
      %v1093 = vld [vmem:[%s1088 + $0x20] sm:$0xff]
      %v1094 = vld [vmem:[%s1088 + $0x28] sm:$0xff]
      %v1095 = vld [vmem:[%s1088 + $0x30] sm:$0xff]
      %v1096 = vld [vmem:[%s1088 + $0x38] sm:$0xff]
      %v1097 = vld [vmem:[%s1088 + $0x40] sm:$0xff]
      %v1098 = vld [vmem:[%s1088 + $0x48] sm:$0xff]
      %v1099 = vld [vmem:[%s1088 + $0x50] sm:$0xff]
      %v1100 = vld [vmem:[%s1088 + $0x58] sm:$0xff]
      %v1101 = vld [vmem:[%s1088 + $0x60] sm:$0xff]
      %v1102 = vld [vmem:[%s1088 + $0x68] sm:$0xff]
      %v1103 = vld [vmem:[%s1088 + $0x70] sm:$0xff]
      %v1104 = vld [vmem:[%s1088 + $0x78] sm:$0xff]
      %v1105 = vld [vmem:[%s1088 + $0x80] sm:$0xff]
      %v1106 = vld [vmem:[%s1088 + $0x88] sm:$0xff]
      %v1107 = vld [vmem:[%s1088 + $0x90] sm:$0xff]
      %v1108 = vld [vmem:[%s1088 + $0x98] sm:$0xff]
      %v1109 = vld [vmem:[%s1088 + $0xa0] sm:$0xff]
      %v1110 = vld [vmem:[%s1088 + $0xa8] sm:$0x11]
      %v1133 = vunpack.c.l.b16 %v1089
      %v1134 = vunpack.c.h.b16 %v1089
      %v1135 = vunpack.c.l.b16 %v1090
      %v1136 = vunpack.c.h.b16 %v1090
      %v1137 = vunpack.c.l.b16 %v1091
      %v1138 = vunpack.c.h.b16 %v1091
      %v1139 = vunpack.c.l.b16 %v1092
      %v1140 = vunpack.c.h.b16 %v1092
      %v1141 = vunpack.c.l.b16 %v1093
      %v1142 = vunpack.c.h.b16 %v1093
      %v1143 = vunpack.c.l.b16 %v1094
      %v1144 = vunpack.c.h.b16 %v1094
      %v1145 = vunpack.c.l.b16 %v1095
      %v1146 = vunpack.c.h.b16 %v1095
      %v1147 = vunpack.c.l.b16 %v1096
      %v1148 = vunpack.c.h.b16 %v1096
      %v1149 = vunpack.c.l.b16 %v1097
      %v1150 = vunpack.c.h.b16 %v1097
      %v1151 = vunpack.c.l.b16 %v1098
      %v1152 = vunpack.c.h.b16 %v1098
      %v1153 = vunpack.c.l.b16 %v1099
      %v1154 = vunpack.c.h.b16 %v1099
      %v1155 = vunpack.c.l.b16 %v1100
      %v1156 = vunpack.c.h.b16 %v1100
      %v1157 = vunpack.c.l.b16 %v1101
      %v1158 = vunpack.c.h.b16 %v1101
      %v1159 = vunpack.c.l.b16 %v1102
      %v1160 = vunpack.c.h.b16 %v1102
      %v1161 = vunpack.c.l.b16 %v1103
      %v1162 = vunpack.c.h.b16 %v1103
      %v1163 = vunpack.c.l.b16 %v1104
      %v1164 = vunpack.c.h.b16 %v1104
      %v1165 = vunpack.c.l.b16 %v1105
      %v1166 = vunpack.c.h.b16 %v1105
      %v1167 = vunpack.c.l.b16 %v1106
      %v1168 = vunpack.c.h.b16 %v1106
      %v1169 = vunpack.c.l.b16 %v1107
      %v1170 = vunpack.c.h.b16 %v1107
      %v1171 = vunpack.c.l.b16 %v1108
      %v1172 = vunpack.c.h.b16 %v1108
      %v1173 = vunpack.c.l.b16 %v1109
      %v1174 = vunpack.c.h.b16 %v1109
      %v1175 = vunpack.c.l.b16 %v1110
      %v1176 = vunpack.c.h.b16 %v1110
      %v1177 = vpack.c.b16 %v1135, %v1133
      %v1178 = vpack.c.b16 %v1136, %v1134
      %v1179 = vpack.c.b16 %v1139, %v1137
      %v1180 = vpack.c.b16 %v1140, %v1138
      %v1181 = vpack.c.b16 %v1143, %v1141
      %v1182 = vpack.c.b16 %v1144, %v1142
      %v1183 = vpack.c.b16 %v1147, %v1145
      %v1184 = vpack.c.b16 %v1148, %v1146
      %v1185 = vpack.c.b16 %v1151, %v1149
      %v1186 = vpack.c.b16 %v1152, %v1150
      %v1187 = vpack.c.b16 %v1155, %v1153
      %v1188 = vpack.c.b16 %v1156, %v1154
      %v1189 = vpack.c.b16 %v1159, %v1157
      %v1190 = vpack.c.b16 %v1160, %v1158
      %v1191 = vpack.c.b16 %v1163, %v1161
      %v1192 = vpack.c.b16 %v1164, %v1162
      %v1193 = vpack.c.b16 %v1167, %v1165
      %v1194 = vpack.c.b16 %v1168, %v1166
      %v1195 = vpack.c.b16 %v1171, %v1169
      %v1196 = vpack.c.b16 %v1172, %v1170
      %v1197 = vpack.c.b16 %v1175, %v1173
      %v1198 = vpack.c.b16 %v1176, %v1174
      %v1211 = vsel %vm374, %v1178, 0
      %v1214 = vsel %vm374, %v1180, 0
      %v1217 = vsel %vm374, %v1182, 0
      %v1220 = vsel %vm374, %v1184, 0
      %v1223 = vsel %vm374, %v1186, 0
      %v1226 = vsel %vm374, %v1188, 0
      %v1229 = vsel %vm374, %v1190, 0
      %v1232 = vsel %vm374, %v1192, 0
      %v1235 = vsel %vm374, %v1194, 0
      %v1238 = vsel %vm374, %v1196, 0
      %v1241 = vsel %vm374, %v1198, 0
      %1243 = vmatprep.subr.bf16.mxu0 0
      %1244 = vmatpush1.bf16.msra.mxu0 %v355
      %1245 = vmatprep.subr.bf16.mxu0 0
      %1246 = vmatpush1.bf16.msra.mxu0 %v356
      %1247 = vmatprep.subr.bf16.mxu0 0
      %1248 = vmatpush1.bf16.msra.mxu0 %v357
      %1249 = vmatprep.subr.bf16.mxu0 0
      %1250 = vmatpush1.bf16.msra.mxu0 %v358
      %1251 = vmatprep.subr.bf16.mxu0 0
      %1252 = vmatpush1.bf16.msra.mxu0 %v359
      %1253 = vmatprep.subr.bf16.mxu0 0
      %1254 = vmatpush1.bf16.msra.mxu0 %v360
      %1255 = vmatprep.subr.bf16.mxu0 0
      %1256 = vmatpush1.bf16.msra.mxu0 %v361
      %1257 = vmatprep.subr.bf16.mxu0 0
      %1258 = vmatpush1.bf16.msra.mxu0 %v362
      %1259 = vmatprep.subr.bf16.mxu0 0
      %1260 = vmatpush1.bf16.msra.mxu0 %v363
      %1261 = vmatprep.subr.bf16.mxu0 0
      %1262 = vmatpush1.bf16.msra.mxu0 %v413
      %1263 = vmatprep.subr.bf16.mxu0 0
      %1264 = vmatpush1.bf16.msra.mxu0 0
      %1265 = vmatprep.subr.bf16.mxu0 0
      %1266 = vmatpush1.bf16.msra.mxu0 0
      %1267 = vmatprep.subr.bf16.mxu0 0
      %1268 = vmatpush1.bf16.msra.mxu0 0
      %1269 = vmatprep.subr.bf16.mxu0 0
      %1270 = vmatpush1.bf16.msra.mxu0 0
      %1271 = vmatprep.subr.bf16.mxu0 0
      %1272 = vmatpush1.bf16.msra.mxu0 0
      %1273 = vmatprep.subr.bf16.mxu0 0
      %1274 = vmatpush1.bf16.msra.mxu0 0
      %1275 = vmatprep.mubr.bf16.mxu0 %v1211
      %1276 = vmatmul.mubr.bf16.gmra.mrb[0].mxu0 %v1177
      %v1277 = vpop.f32.mrb[0].mxu0
      %v1278 = vadd.f32 0.0, %v1277
      %v1279 = vpop.f32.mrb[0].mxu0
      %v1280 = vpop.f32.mrb[0].mxu0
      %v1281 = vadd.f32 0.0, %v1280
      %v1282 = vpop.f32.mrb[0].mxu0
      %1283 = vmatprep.mubr.bf16.mxu0 %v1214
      %1284 = vmatmul.mubr.bf16.gmra.mrb[0].mxu0 %v1179
      %v1285 = vpop.f32.mrb[0].mxu0
      %v1286 = vadd.f32 0.0, %v1285
      %v1287 = vpop.f32.mrb[0].mxu0
      %v1288 = vpop.f32.mrb[0].mxu0
      %v1289 = vadd.f32 0.0, %v1288
      %v1290 = vpop.f32.mrb[0].mxu0
      %1291 = vmatprep.mubr.bf16.mxu0 %v1217
      %1292 = vmatmul.mubr.bf16.gmra.mrb[0].mxu0 %v1181
      %v1293 = vpop.f32.mrb[0].mxu0
      %v1294 = vadd.f32 0.0, %v1293
      %v1295 = vpop.f32.mrb[0].mxu0
      %v1296 = vpop.f32.mrb[0].mxu0
      %v1297 = vadd.f32 0.0, %v1296
      %v1298 = vpop.f32.mrb[0].mxu0
      %1299 = vmatprep.mubr.bf16.mxu0 %v1220
      %1300 = vmatmul.mubr.bf16.gmra.mrb[0].mxu0 %v1183
      %v1301 = vpop.f32.mrb[0].mxu0
      %v1302 = vadd.f32 0.0, %v1301
      %v1303 = vpop.f32.mrb[0].mxu0
      %v1304 = vpop.f32.mrb[0].mxu0
      %v1305 = vadd.f32 0.0, %v1304
      %v1306 = vpop.f32.mrb[0].mxu0
      %1307 = vmatprep.mubr.bf16.mxu0 %v1223
      %1308 = vmatmul.mubr.bf16.gmra.mrb[0].mxu0 %v1185
      %v1309 = vpop.f32.mrb[0].mxu0
      %v1310 = vadd.f32 0.0, %v1309
      %v1311 = vpop.f32.mrb[0].mxu0
      %v1312 = vpop.f32.mrb[0].mxu0
      %v1313 = vadd.f32 0.0, %v1312
      %v1314 = vpop.f32.mrb[0].mxu0
      %1315 = vmatprep.mubr.bf16.mxu0 %v1226
      %1316 = vmatmul.mubr.bf16.gmra.mrb[0].mxu0 %v1187
      %v1317 = vpop.f32.mrb[0].mxu0
      %v1318 = vadd.f32 0.0, %v1317
      %v1319 = vpop.f32.mrb[0].mxu0
      %v1320 = vpop.f32.mrb[0].mxu0
      %v1321 = vadd.f32 0.0, %v1320
      %v1322 = vpop.f32.mrb[0].mxu0
      %1323 = vmatprep.mubr.bf16.mxu0 %v1229
      %1324 = vmatmul.mubr.bf16.gmra.mrb[0].mxu0 %v1189
      %v1325 = vpop.f32.mrb[0].mxu0
      %v1326 = vadd.f32 0.0, %v1325
      %v1327 = vpop.f32.mrb[0].mxu0
      %v1328 = vpop.f32.mrb[0].mxu0
      %v1329 = vadd.f32 0.0, %v1328
      %v1330 = vpop.f32.mrb[0].mxu0
      %1331 = vmatprep.mubr.bf16.mxu0 %v1232
      %1332 = vmatmul.mubr.bf16.gmra.mrb[0].mxu0 %v1191
      %v1333 = vpop.f32.mrb[0].mxu0
      %v1334 = vadd.f32 0.0, %v1333
      %v1335 = vpop.f32.mrb[0].mxu0
      %v1336 = vpop.f32.mrb[0].mxu0
      %v1337 = vadd.f32 0.0, %v1336
      %v1338 = vpop.f32.mrb[0].mxu0
      %1339 = vmatprep.mubr.bf16.mxu0 %v1235
      %1340 = vmatmul.mubr.bf16.gmra.mrb[0].mxu0 %v1193
      %v1341 = vpop.f32.mrb[0].mxu0
      %v1342 = vadd.f32 0.0, %v1341
      %v1343 = vpop.f32.mrb[0].mxu0
      %v1344 = vpop.f32.mrb[0].mxu0
      %v1345 = vadd.f32 0.0, %v1344
      %v1346 = vpop.f32.mrb[0].mxu0
      %1347 = vmatprep.mubr.bf16.mxu0 %v1238
      %1348 = vmatmul.mubr.bf16.gmra.mrb[0].mxu0 %v1195
      %v1349 = vpop.f32.mrb[0].mxu0
      %v1350 = vadd.f32 0.0, %v1349
      %v1351 = vpop.f32.mrb[0].mxu0
      %v1352 = vpop.f32.mrb[0].mxu0
      %v1353 = vadd.f32 0.0, %v1352
      %v1354 = vpop.f32.mrb[0].mxu0
      %1355 = vmatprep.mubr.bf16.mxu0 %v1241
      %1356 = vmatmul.mubr.bf16.gmra.mrb[0].mxu0 %v1197
      %v1357 = vpop.f32.mrb[0].mxu0
      %v1358 = vadd.f32 0.0, %v1357
      %v1359 = vpop.f32.mrb[0].mxu0
      %v1360 = vpop.f32.mrb[0].mxu0
      %v1361 = vadd.f32 0.0, %v1360
      %v1362 = vpop.f32.mrb[0].mxu0
      %1363 = vdwg.mxu0
      %v1364 = vmax.f32 %v450, %v726
      %v1365 = vmax.f32 %v453, %v729
      %v1366 = vmax.f32 %v458, %v734
      %v1367 = vmax.f32 %v461, %v737
      %v1368 = vmax.f32 %v466, %v742
      %v1369 = vmax.f32 %v469, %v745
      %v1370 = vmax.f32 %v474, %v750
      %v1371 = vmax.f32 %v477, %v753
      %v1372 = vmax.f32 %v482, %v758
      %v1373 = vmax.f32 %v485, %v761
      %v1374 = vmax.f32 %v490, %v766
      %v1375 = vmax.f32 %v493, %v769
      %v1376 = vmax.f32 %v498, %v774
      %v1377 = vmax.f32 %v501, %v777
      %v1378 = vmax.f32 %v506, %v782
      %v1379 = vmax.f32 %v509, %v785
      %v1380 = vmax.f32 %v514, %v790
      %v1381 = vmax.f32 %v517, %v793
      %v1382 = vmax.f32 %v522, %v798
      %v1383 = vmax.f32 %v525, %v801
      %v1384 = vmax.f32 %v530, %v806
      %v1385 = vmax.f32 %v533, %v809
      %v1386 = vmax.f32 %v1002, %v1278
      %v1387 = vmax.f32 %v1005, %v1281
      %v1388 = vmax.f32 %v1010, %v1286
      %v1389 = vmax.f32 %v1013, %v1289
      %v1390 = vmax.f32 %v1018, %v1294
      %v1391 = vmax.f32 %v1021, %v1297
      %v1392 = vmax.f32 %v1026, %v1302
      %v1393 = vmax.f32 %v1029, %v1305
      %v1394 = vmax.f32 %v1034, %v1310
      %v1395 = vmax.f32 %v1037, %v1313
      %v1396 = vmax.f32 %v1042, %v1318
      %v1397 = vmax.f32 %v1045, %v1321
      %v1398 = vmax.f32 %v1050, %v1326
      %v1399 = vmax.f32 %v1053, %v1329
      %v1400 = vmax.f32 %v1058, %v1334
      %v1401 = vmax.f32 %v1061, %v1337
      %v1402 = vmax.f32 %v1066, %v1342
      %v1403 = vmax.f32 %v1069, %v1345
      %v1404 = vmax.f32 %v1074, %v1350
      %v1405 = vmax.f32 %v1077, %v1353
      %v1406 = vmax.f32 %v1082, %v1358
      %v1407 = vmax.f32 %v1085, %v1361
      %v1408 = vmax.f32 %v1364, %v1386
      %v1409 = vmax.f32 %v1365, %v1387
      %v1410 = vmax.f32 %v1366, %v1388
      %v1411 = vmax.f32 %v1367, %v1389
      %v1412 = vmax.f32 %v1368, %v1390
      %v1413 = vmax.f32 %v1369, %v1391
      %v1414 = vmax.f32 %v1370, %v1392
      %v1415 = vmax.f32 %v1371, %v1393
      %v1416 = vmax.f32 %v1372, %v1394
      %v1417 = vmax.f32 %v1373, %v1395
      %v1418 = vmax.f32 %v1374, %v1396
      %v1419 = vmax.f32 %v1375, %v1397
      %v1420 = vmax.f32 %v1376, %v1398
      %v1421 = vmax.f32 %v1377, %v1399
      %v1422 = vmax.f32 %v1378, %v1400
      %v1423 = vmax.f32 %v1379, %v1401
      %v1424 = vmax.f32 %v1380, %v1402
      %v1425 = vmax.f32 %v1381, %v1403
      %v1426 = vmax.f32 %v1382, %v1404
      %v1427 = vmax.f32 %v1383, %v1405
      %v1428 = vmax.f32 %v1384, %v1406
      %v1429 = vmax.f32 %v1385, %v1407
      %v1430 = vld [vmem:[%s2] sm:$0x1]
      %v1432 = vlaneseq
      %v1433 = vshrl.u32 %v1432, 7
      %v1434 = vsub.s32 0, %v1433
      %v1435 = vrot.slane %v1430, %v1434
      %v1437 = vadd.f32 %v1408, %v1435
      %v1438 = vadd.f32 %v1409, %v1435
      %v1439 = vadd.f32 %v1410, %v1435
      %v1440 = vadd.f32 %v1411, %v1435
      %v1441 = vadd.f32 %v1412, %v1435
      %v1442 = vadd.f32 %v1413, %v1435
      %v1443 = vadd.f32 %v1414, %v1435
      %v1444 = vadd.f32 %v1415, %v1435
      %v1445 = vadd.f32 %v1416, %v1435
      %v1446 = vadd.f32 %v1417, %v1435
      %v1447 = vadd.f32 %v1418, %v1435
      %v1448 = vadd.f32 %v1419, %v1435
      %v1449 = vadd.f32 %v1420, %v1435
      %v1450 = vadd.f32 %v1421, %v1435
      %v1451 = vadd.f32 %v1422, %v1435
      %v1452 = vadd.f32 %v1423, %v1435
      %v1453 = vadd.f32 %v1424, %v1435
      %v1454 = vadd.f32 %v1425, %v1435
      %v1455 = vadd.f32 %v1426, %v1435
      %v1456 = vadd.f32 %v1427, %v1435
      %v1457 = vadd.f32 %v1428, %v1435
      %v1458 = vadd.f32 %v1429, %v1435
      %v1459 = vpack.c.bf16 %v1438, %v1437
      %v1460 = vpack.c.bf16 %v1440, %v1439
      %v1461 = vpack.c.bf16 %v1442, %v1441
      %v1462 = vpack.c.bf16 %v1444, %v1443
      %v1463 = vpack.c.bf16 %v1446, %v1445
      %v1464 = vpack.c.bf16 %v1448, %v1447
      %v1465 = vpack.c.bf16 %v1450, %v1449
      %v1466 = vpack.c.bf16 %v1452, %v1451
      %v1467 = vpack.c.bf16 %v1454, %v1453
      %v1468 = vpack.c.bf16 %v1456, %v1455
      %v1469 = vpack.c.bf16 %v1458, %v1457
      %v1481 = vunpack.c.l.b16 %v1459
      %v1482 = vunpack.c.h.b16 %v1459
      %v1483 = vunpack.c.l.b16 %v1460
      %v1484 = vunpack.c.h.b16 %v1460
      %v1485 = vunpack.c.l.b16 %v1461
      %v1486 = vunpack.c.h.b16 %v1461
      %v1487 = vunpack.c.l.b16 %v1462
      %v1488 = vunpack.c.h.b16 %v1462
      %v1489 = vunpack.c.l.b16 %v1463
      %v1490 = vunpack.c.h.b16 %v1463
      %v1491 = vunpack.c.l.b16 %v1464
      %v1492 = vunpack.c.h.b16 %v1464
      %v1493 = vunpack.c.l.b16 %v1465
      %v1494 = vunpack.c.h.b16 %v1465
      %v1495 = vunpack.c.l.b16 %v1466
      %v1496 = vunpack.c.h.b16 %v1466
      %v1497 = vunpack.c.l.b16 %v1467
      %v1498 = vunpack.c.h.b16 %v1467
      %v1499 = vunpack.c.l.b16 %v1468
      %v1500 = vunpack.c.h.b16 %v1468
      %v1501 = vunpack.c.l.b16 %v1469
      %v1502 = vunpack.c.h.b16 %v1469
      %v1503 = vpack.c.b16 %v1481, %v1481
      %v1504 = vpack.c.b16 %v1482, %v1482
      %v1505 = vpack.c.b16 %v1483, %v1483
      %v1506 = vpack.c.b16 %v1484, %v1484
      %v1507 = vpack.c.b16 %v1485, %v1485
      %v1508 = vpack.c.b16 %v1486, %v1486
      %v1509 = vpack.c.b16 %v1487, %v1487
      %v1510 = vpack.c.b16 %v1488, %v1488
      %v1511 = vpack.c.b16 %v1489, %v1489
      %v1512 = vpack.c.b16 %v1490, %v1490
      %v1513 = vpack.c.b16 %v1491, %v1491
      %v1514 = vpack.c.b16 %v1492, %v1492
      %v1515 = vpack.c.b16 %v1493, %v1493
      %v1516 = vpack.c.b16 %v1494, %v1494
      %v1517 = vpack.c.b16 %v1495, %v1495
      %v1518 = vpack.c.b16 %v1496, %v1496
      %v1519 = vpack.c.b16 %v1497, %v1497
      %v1520 = vpack.c.b16 %v1498, %v1498
      %v1521 = vpack.c.b16 %v1499, %v1499
      %v1522 = vpack.c.b16 %v1500, %v1500
      %v1523 = vpack.c.b16 %v1501, %v1501
      %v1524 = vpack.c.b16 %v1502, %v1502
      %1547 = vst [vmem:[%s175] sm:$0xf] %v1503
      %1548 = vst [vmem:[%s175 + $0x4] sm:$0xf] %v1504
      %1549 = vst [vmem:[%s175 + $0x8] sm:$0xf] %v1505
      %1550 = vst [vmem:[%s175 + $0xc] sm:$0xf] %v1506
      %1551 = vst [vmem:[%s175 + $0x10] sm:$0xf] %v1507
      %1552 = vst [vmem:[%s175 + $0x14] sm:$0xf] %v1508
      %1553 = vst [vmem:[%s175 + $0x18] sm:$0xf] %v1509
      %1554 = vst [vmem:[%s175 + $0x1c] sm:$0xf] %v1510
      %1555 = vst [vmem:[%s175 + $0x20] sm:$0xf] %v1511
      %1556 = vst [vmem:[%s175 + $0x24] sm:$0xf] %v1512
      %1557 = vst [vmem:[%s175 + $0x28] sm:$0xf] %v1513
      %1558 = vst [vmem:[%s175 + $0x2c] sm:$0xf] %v1514
      %1559 = vst [vmem:[%s175 + $0x30] sm:$0xf] %v1515
      %1560 = vst [vmem:[%s175 + $0x34] sm:$0xf] %v1516
      %1561 = vst [vmem:[%s175 + $0x38] sm:$0xf] %v1517
      %1562 = vst [vmem:[%s175 + $0x3c] sm:$0xf] %v1518
      %1563 = vst [vmem:[%s175 + $0x40] sm:$0xf] %v1519
      %1564 = vst [vmem:[%s175 + $0x44] sm:$0xf] %v1520
      %1565 = vst [vmem:[%s175 + $0x48] sm:$0xf] %v1521
      %1566 = vst [vmem:[%s175 + $0x4c] sm:$0xf] %v1522
      %1567 = vst [vmem:[%s175 + $0x50] sm:$0xf] %v1523
      %vm1568 = vcmask 1040384
      %vm1569 = vsmask.f32 256
      %vm1570 = vmand %vm1568, %vm1569
      %v1571 = vld [vmem:[%s175 + $0x54] sm:$0x1]
      %v1572 = vsel %vm1570, %v1524, %v1571
      %1573 = vst [vmem:[%s175 + $0x54] sm:$0x1] %v1572
      %p1574 = scmp.lt.s32.totalorder %s14, 1
      %s1575 = scalar_select %p1574, %s14, 1
      %s1576 = smul.addr %s1575, 22
      %s1577 = smul.addr %s1576, 4
      %s1578 = scalar_lea.vmem %s3, %s1577
      // Predicated region
      $region33: #{vanilla_cnn_forward.2} parent=31 // pred_check
        %p1579 = pneg %p100
      $region34: #{vanilla_cnn_forward.2} parent=31 // pred_check_branch
        %1581 = sbr.rel (%p1579) target = $region36
      $region35: #{vanilla_cnn_forward.2} parent=31 // pred_region
        _
      $region36: #{vanilla_cnn_forward.2} parent=31 // pred_fallthru
        _
    $region32: #{vanilla_cnn_forward.2} parent=5 // pred_fallthru
      _
    %p1582 = scmp.le.s32.totalorder 2, %s9
    // Predicated region
    $region37: #{vanilla_cnn_forward.2} parent=5 // pred_check
      %p1583 = pneg %p1582
    $region38: #{vanilla_cnn_forward.2} parent=5 // pred_check_branch
      %1585 = sbr.rel (%p1583) target = $region40
    $region39: #{vanilla_cnn_forward.2} parent=5 // pred_region
      %s1586 = ssub.s32 %s9, 2
      // Predicated region
      $region41: #{vanilla_cnn_forward.2} parent=39 // pred_check
        %p1587 = pneg %p106
      $region42: #{vanilla_cnn_forward.2} parent=39 // pred_check_branch
        %1589 = sbr.rel (%p1587) target = $region44
      $region43: #{vanilla_cnn_forward.2} parent=39 // pred_region
        %p1590 = scmp.lt.s32.totalorder %s15, 1
        %s1591 = scalar_select %p1590, %s15, 1
        %s1592 = smul.addr %s1591, 22
        %s1593 = smul.addr %s1592, 4
        %s1594 = scalar_lea.vmem %s3, %s1593
      $region44: #{vanilla_cnn_forward.2} parent=39 // pred_fallthru
        _
    $region40: #{vanilla_cnn_forward.2} parent=5 // pred_fallthru
      _
  $region6: #{vanilla_cnn_forward.2} parent=0 // loop_footer
    %s13 = sadd.s32 1, %s9
  $region7: #{vanilla_cnn_forward.2} parent=0 // loop_footer_branch
    %8 = sbr.rel target = $region3
  $region8: #{vanilla_cnn_forward.2} parent=0 // loop_exit
    _

// kernel: vanilla_cnn_forward.3
$region0: #{vanilla_cnn_forward.3}
  #allocation0 [shape = 'u32[]', space=smem, size = 0x4, offset = 0x4, fixed_abs, tag = 'smem constant byte address 0x4 - core index']
  #allocation1 [shape = 'u32[144,128]{1,0:T(1,128)}', space=vmem, size = 0x12000, scoped, tag = 'internal scratch']
  %s0 = inlined_call_operand.vmem [shape: bf16[8,21632], index: 0, kind: input, shape index: {}]
  %s1 = inlined_call_operand.vmem [shape: bf16[21632,128], index: 1, kind: input, shape index: {}]
  %s2 = inlined_call_operand.vmem [shape: f32[1,128], index: 2, kind: input, shape index: {}]
  %s3 = inlined_call_operand.vmem [shape: f32[8,128], index: 3, kind: output, shape index: {}]
  %s4 = sld [smem:[#allocation0]]
  $region22: #{vanilla_cnn_forward.3} parent=0
    _
  %s6 = ssub.s32 1, %s4
  %s7 = scalar_select 0, %s6, %s4
  // Predicated region
  $region2: #{vanilla_cnn_forward.3} parent=0 // pred_check
    _
  $region3: #{vanilla_cnn_forward.3} parent=0 // pred_check_branch
    %9 = sbr.rel (0) target = $region5
  $region4: #{vanilla_cnn_forward.3} parent=0 // pred_region
    _
  $region5: #{vanilla_cnn_forward.3} parent=0 // pred_fallthru
    _
  // Predicated region
  $region6: #{vanilla_cnn_forward.3} parent=0 // pred_check
    _
  $region7: #{vanilla_cnn_forward.3} parent=0 // pred_check_branch
    %11 = sbr.rel (0) target = $region9
  $region8: #{vanilla_cnn_forward.3} parent=0 // pred_region
    _
  $region9: #{vanilla_cnn_forward.3} parent=0 // pred_fallthru
    _
  // Predicated region
  $region10: #{vanilla_cnn_forward.3} parent=0 // pred_check
    _
  $region11: #{vanilla_cnn_forward.3} parent=0 // pred_check_branch
    %13 = sbr.rel (0) target = $region13
  $region12: #{vanilla_cnn_forward.3} parent=0 // pred_region
    _
  $region13: #{vanilla_cnn_forward.3} parent=0 // pred_fallthru
    _
  %v15 = vld [vmem:[%s0] sm:$0xff]
  %v16 = vld [vmem:[%s0 + $0x8] sm:$0xff]
  %v17 = vld [vmem:[%s0 + $0x10] sm:$0xff]
  %v18 = vld [vmem:[%s0 + $0x18] sm:$0xff]
  %v19 = vld [vmem:[%s0 + $0x20] sm:$0xff]
  %v20 = vld [vmem:[%s0 + $0x28] sm:$0xff]
  %v21 = vld [vmem:[%s0 + $0x30] sm:$0xff]
  %v22 = vld [vmem:[%s0 + $0x38] sm:$0xff]
  %v23 = vld [vmem:[%s0 + $0x40] sm:$0xff]
  %v24 = vld [vmem:[%s0 + $0x48] sm:$0xff]
  %v25 = vld [vmem:[%s0 + $0x50] sm:$0xff]
  %v26 = vld [vmem:[%s0 + $0x58] sm:$0xff]
  %v27 = vld [vmem:[%s0 + $0x60] sm:$0xff]
  %v28 = vld [vmem:[%s0 + $0x68] sm:$0xff]
  %v29 = vld [vmem:[%s0 + $0x70] sm:$0xff]
  %v30 = vld [vmem:[%s0 + $0x78] sm:$0xff]
  %v31 = vld [vmem:[%s0 + $0x80] sm:$0xff]
  %v32 = vld [vmem:[%s0 + $0x88] sm:$0xff]
  %v33 = vld [vmem:[%s0 + $0x90] sm:$0xff]
  %v34 = vld [vmem:[%s0 + $0x98] sm:$0xff]
  %v35 = vld [vmem:[%s0 + $0xa0] sm:$0xff]
  %v36 = vld [vmem:[%s0 + $0xa8] sm:$0xff]
  %v37 = vld [vmem:[%s0 + $0xb0] sm:$0xff]
  %v38 = vld [vmem:[%s0 + $0xb8] sm:$0xff]
  %v39 = vld [vmem:[%s0 + $0xc0] sm:$0xff]
  %v40 = vld [vmem:[%s0 + $0xc8] sm:$0xff]
  %v41 = vld [vmem:[%s0 + $0xd0] sm:$0xff]
  %v42 = vld [vmem:[%s0 + $0xd8] sm:$0xff]
  %v43 = vld [vmem:[%s0 + $0xe0] sm:$0xff]
  %v44 = vld [vmem:[%s0 + $0xe8] sm:$0xff]
  %v45 = vld [vmem:[%s0 + $0xf0] sm:$0xff]
  %v46 = vld [vmem:[%s0 + $0xf8] sm:$0xff]
  %v47 = vld [vmem:[%s0 + $0x100] sm:$0xff]
  %v48 = vld [vmem:[%s0 + $0x108] sm:$0xff]
  %v49 = vld [vmem:[%s0 + $0x110] sm:$0xff]
  %v50 = vld [vmem:[%s0 + $0x118] sm:$0xff]
  %v51 = vld [vmem:[%s0 + $0x120] sm:$0xff]
  %v52 = vld [vmem:[%s0 + $0x128] sm:$0xff]
  %v53 = vld [vmem:[%s0 + $0x130] sm:$0xff]
  %v54 = vld [vmem:[%s0 + $0x138] sm:$0xff]
  %v55 = vld [vmem:[%s0 + $0x140] sm:$0xff]
  %v56 = vld [vmem:[%s0 + $0x148] sm:$0xff]
  %v57 = vld [vmem:[%s0 + $0x150] sm:$0xff]
  %v58 = vld [vmem:[%s0 + $0x158] sm:$0xff]
  %v59 = vld [vmem:[%s0 + $0x160] sm:$0xff]
  %v60 = vld [vmem:[%s0 + $0x168] sm:$0xff]
  %v61 = vld [vmem:[%s0 + $0x170] sm:$0xff]
  %v62 = vld [vmem:[%s0 + $0x178] sm:$0xff]
  %v63 = vld [vmem:[%s0 + $0x180] sm:$0xff]
  %v64 = vld [vmem:[%s0 + $0x188] sm:$0xff]
  %v65 = vld [vmem:[%s0 + $0x190] sm:$0xff]
  %v66 = vld [vmem:[%s0 + $0x198] sm:$0xff]
  %v67 = vld [vmem:[%s0 + $0x1a0] sm:$0xff]
  %v68 = vld [vmem:[%s0 + $0x1a8] sm:$0xff]
  %v69 = vld [vmem:[%s0 + $0x1b0] sm:$0xff]
  %v70 = vld [vmem:[%s0 + $0x1b8] sm:$0xff]
  %v71 = vld [vmem:[%s0 + $0x1c0] sm:$0xff]
  %v72 = vld [vmem:[%s0 + $0x1c8] sm:$0xff]
  %v73 = vld [vmem:[%s0 + $0x1d0] sm:$0xff]
  %v74 = vld [vmem:[%s0 + $0x1d8] sm:$0xff]
  %v75 = vld [vmem:[%s0 + $0x1e0] sm:$0xff]
  %v76 = vld [vmem:[%s0 + $0x1e8] sm:$0xff]
  %v77 = vld [vmem:[%s0 + $0x1f0] sm:$0xff]
  %v78 = vld [vmem:[%s0 + $0x1f8] sm:$0xff]
  %v79 = vld [vmem:[%s0 + $0x200] sm:$0xff]
  %v80 = vld [vmem:[%s0 + $0x208] sm:$0xff]
  %v81 = vld [vmem:[%s0 + $0x210] sm:$0xff]
  %v82 = vld [vmem:[%s0 + $0x218] sm:$0xff]
  %v83 = vld [vmem:[%s0 + $0x220] sm:$0xff]
  %v84 = vld [vmem:[%s0 + $0x228] sm:$0xff]
  %v85 = vld [vmem:[%s0 + $0x230] sm:$0xff]
  %v86 = vld [vmem:[%s0 + $0x238] sm:$0xff]
  %v87 = vld [vmem:[%s0 + $0x240] sm:$0xff]
  %v88 = vld [vmem:[%s0 + $0x248] sm:$0xff]
  %v89 = vld [vmem:[%s0 + $0x250] sm:$0xff]
  %v90 = vld [vmem:[%s0 + $0x258] sm:$0xff]
  %v91 = vld [vmem:[%s0 + $0x260] sm:$0xff]
  %v92 = vld [vmem:[%s0 + $0x268] sm:$0xff]
  %v93 = vld [vmem:[%s0 + $0x270] sm:$0xff]
  %v94 = vld [vmem:[%s0 + $0x278] sm:$0xff]
  %v95 = vld [vmem:[%s0 + $0x280] sm:$0xff]
  %v96 = vld [vmem:[%s0 + $0x288] sm:$0xff]
  %v97 = vld [vmem:[%s0 + $0x290] sm:$0xff]
  %v98 = vld [vmem:[%s0 + $0x298] sm:$0xff]
  %v99 = vld [vmem:[%s0 + $0x2a0] sm:$0xf]
  %v100 = vld [vmem:[%s1] sm:$0xf]
  %v101 = vld [vmem:[%s1 + $0x4] sm:$0xf]
  %v102 = vld [vmem:[%s1 + $0x8] sm:$0xf]
  %v103 = vld [vmem:[%s1 + $0xc] sm:$0xf]
  %v104 = vld [vmem:[%s1 + $0x10] sm:$0xf]
  %v105 = vld [vmem:[%s1 + $0x14] sm:$0xf]
  %v106 = vld [vmem:[%s1 + $0x18] sm:$0xf]
  %v107 = vld [vmem:[%s1 + $0x1c] sm:$0xf]
  %v108 = vld [vmem:[%s1 + $0x20] sm:$0xf]
  %v109 = vld [vmem:[%s1 + $0x24] sm:$0xf]
  %v110 = vld [vmem:[%s1 + $0x28] sm:$0xf]
  %v111 = vld [vmem:[%s1 + $0x2c] sm:$0xf]
  %v112 = vld [vmem:[%s1 + $0x30] sm:$0xf]
  %v113 = vld [vmem:[%s1 + $0x34] sm:$0xf]
  %v114 = vld [vmem:[%s1 + $0x38] sm:$0xf]
  %v115 = vld [vmem:[%s1 + $0x3c] sm:$0xf]
  %v116 = vld [vmem:[%s1 + $0x40] sm:$0xf]
  %v117 = vld [vmem:[%s1 + $0x44] sm:$0xf]
  %v118 = vld [vmem:[%s1 + $0x48] sm:$0xf]
  %v119 = vld [vmem:[%s1 + $0x4c] sm:$0xf]
  %v120 = vld [vmem:[%s1 + $0x50] sm:$0xf]
  %v121 = vld [vmem:[%s1 + $0x54] sm:$0xf]
  %v122 = vld [vmem:[%s1 + $0x58] sm:$0xf]
  %v123 = vld [vmem:[%s1 + $0x5c] sm:$0xf]
  %v124 = vld [vmem:[%s1 + $0x60] sm:$0xf]
  %v125 = vld [vmem:[%s1 + $0x64] sm:$0xf]
  %v126 = vld [vmem:[%s1 + $0x68] sm:$0xf]
  %v127 = vld [vmem:[%s1 + $0x6c] sm:$0xf]
  %v128 = vld [vmem:[%s1 + $0x70] sm:$0xf]
  %v129 = vld [vmem:[%s1 + $0x74] sm:$0xf]
  %v130 = vld [vmem:[%s1 + $0x78] sm:$0xf]
  %v131 = vld [vmem:[%s1 + $0x7c] sm:$0xf]
  %v132 = vld [vmem:[%s1 + $0x80] sm:$0xf]
  %v133 = vld [vmem:[%s1 + $0x84] sm:$0xf]
  %v134 = vld [vmem:[%s1 + $0x88] sm:$0xf]
  %v135 = vld [vmem:[%s1 + $0x8c] sm:$0xf]
  %v136 = vld [vmem:[%s1 + $0x90] sm:$0xf]
  %v137 = vld [vmem:[%s1 + $0x94] sm:$0xf]
  %v138 = vld [vmem:[%s1 + $0x98] sm:$0xf]
  %v139 = vld [vmem:[%s1 + $0x9c] sm:$0xf]
  %v140 = vld [vmem:[%s1 + $0xa0] sm:$0xf]
  %v141 = vld [vmem:[%s1 + $0xa4] sm:$0xf]
  %v142 = vld [vmem:[%s1 + $0xa8] sm:$0xf]
  %v143 = vld [vmem:[%s1 + $0xac] sm:$0xf]
  %v144 = vld [vmem:[%s1 + $0xb0] sm:$0xf]
  %v145 = vld [vmem:[%s1 + $0xb4] sm:$0xf]
  %v146 = vld [vmem:[%s1 + $0xb8] sm:$0xf]
  %v147 = vld [vmem:[%s1 + $0xbc] sm:$0xf]
  %v148 = vld [vmem:[%s1 + $0xc0] sm:$0xf]
  %v149 = vld [vmem:[%s1 + $0xc4] sm:$0xf]
  %v150 = vld [vmem:[%s1 + $0xc8] sm:$0xf]
  %v151 = vld [vmem:[%s1 + $0xcc] sm:$0xf]
  %v152 = vld [vmem:[%s1 + $0xd0] sm:$0xf]
  %v153 = vld [vmem:[%s1 + $0xd4] sm:$0xf]
  %v154 = vld [vmem:[%s1 + $0xd8] sm:$0xf]
  %v155 = vld [vmem:[%s1 + $0xdc] sm:$0xf]
  %v156 = vld [vmem:[%s1 + $0xe0] sm:$0xf]
  %v157 = vld [vmem:[%s1 + $0xe4] sm:$0xf]
  %v158 = vld [vmem:[%s1 + $0xe8] sm:$0xf]
  %v159 = vld [vmem:[%s1 + $0xec] sm:$0xf]
  %v160 = vld [vmem:[%s1 + $0xf0] sm:$0xf]
  %v161 = vld [vmem:[%s1 + $0xf4] sm:$0xf]
  %v162 = vld [vmem:[%s1 + $0xf8] sm:$0xf]
  %v163 = vld [vmem:[%s1 + $0xfc] sm:$0xf]
  %v164 = vld [vmem:[%s1 + $0x100] sm:$0xf]
  %v165 = vld [vmem:[%s1 + $0x104] sm:$0xf]
  %v166 = vld [vmem:[%s1 + $0x108] sm:$0xf]
  %v167 = vld [vmem:[%s1 + $0x10c] sm:$0xf]
  %v168 = vld [vmem:[%s1 + $0x110] sm:$0xf]
  %v169 = vld [vmem:[%s1 + $0x114] sm:$0xf]
  %v170 = vld [vmem:[%s1 + $0x118] sm:$0xf]
  %v171 = vld [vmem:[%s1 + $0x11c] sm:$0xf]
  %v172 = vld [vmem:[%s1 + $0x120] sm:$0xf]
  %v173 = vld [vmem:[%s1 + $0x124] sm:$0xf]
  %v174 = vld [vmem:[%s1 + $0x128] sm:$0xf]
  %v175 = vld [vmem:[%s1 + $0x12c] sm:$0xf]
  %v176 = vld [vmem:[%s1 + $0x130] sm:$0xf]
  %v177 = vld [vmem:[%s1 + $0x134] sm:$0xf]
  %v178 = vld [vmem:[%s1 + $0x138] sm:$0xf]
  %v179 = vld [vmem:[%s1 + $0x13c] sm:$0xf]
  %v180 = vld [vmem:[%s1 + $0x140] sm:$0xf]
  %v181 = vld [vmem:[%s1 + $0x144] sm:$0xf]
  %v182 = vld [vmem:[%s1 + $0x148] sm:$0xf]
  %v183 = vld [vmem:[%s1 + $0x14c] sm:$0xf]
  %v184 = vld [vmem:[%s1 + $0x150] sm:$0xf]
  %v185 = vld [vmem:[%s1 + $0x154] sm:$0xf]
  %v186 = vld [vmem:[%s1 + $0x158] sm:$0xf]
  %v187 = vld [vmem:[%s1 + $0x15c] sm:$0xf]
  %v188 = vld [vmem:[%s1 + $0x160] sm:$0xf]
  %v189 = vld [vmem:[%s1 + $0x164] sm:$0xf]
  %v190 = vld [vmem:[%s1 + $0x168] sm:$0xf]
  %v191 = vld [vmem:[%s1 + $0x16c] sm:$0xf]
  %v192 = vld [vmem:[%s1 + $0x170] sm:$0xf]
  %v193 = vld [vmem:[%s1 + $0x174] sm:$0xf]
  %v194 = vld [vmem:[%s1 + $0x178] sm:$0xf]
  %v195 = vld [vmem:[%s1 + $0x17c] sm:$0xf]
  %v196 = vld [vmem:[%s1 + $0x180] sm:$0xf]
  %v197 = vld [vmem:[%s1 + $0x184] sm:$0xf]
  %v198 = vld [vmem:[%s1 + $0x188] sm:$0xf]
  %v199 = vld [vmem:[%s1 + $0x18c] sm:$0xf]
  %v200 = vld [vmem:[%s1 + $0x190] sm:$0xf]
  %v201 = vld [vmem:[%s1 + $0x194] sm:$0xf]
  %v202 = vld [vmem:[%s1 + $0x198] sm:$0xf]
  %v203 = vld [vmem:[%s1 + $0x19c] sm:$0xf]
  %v204 = vld [vmem:[%s1 + $0x1a0] sm:$0xf]
  %v205 = vld [vmem:[%s1 + $0x1a4] sm:$0xf]
  %v206 = vld [vmem:[%s1 + $0x1a8] sm:$0xf]
  %v207 = vld [vmem:[%s1 + $0x1ac] sm:$0xf]
  %v208 = vld [vmem:[%s1 + $0x1b0] sm:$0xf]
  %v209 = vld [vmem:[%s1 + $0x1b4] sm:$0xf]
  %v210 = vld [vmem:[%s1 + $0x1b8] sm:$0xf]
  %v211 = vld [vmem:[%s1 + $0x1bc] sm:$0xf]
  %v212 = vld [vmem:[%s1 + $0x1c0] sm:$0xf]
  %v213 = vld [vmem:[%s1 + $0x1c4] sm:$0xf]
  %v214 = vld [vmem:[%s1 + $0x1c8] sm:$0xf]
  %v215 = vld [vmem:[%s1 + $0x1cc] sm:$0xf]
  %v216 = vld [vmem:[%s1 + $0x1d0] sm:$0xf]
  %v217 = vld [vmem:[%s1 + $0x1d4] sm:$0xf]
  %v218 = vld [vmem:[%s1 + $0x1d8] sm:$0xf]
  %v219 = vld [vmem:[%s1 + $0x1dc] sm:$0xf]
  %v220 = vld [vmem:[%s1 + $0x1e0] sm:$0xf]
  %v221 = vld [vmem:[%s1 + $0x1e4] sm:$0xf]
  %v222 = vld [vmem:[%s1 + $0x1e8] sm:$0xf]
  %v223 = vld [vmem:[%s1 + $0x1ec] sm:$0xf]
  %v224 = vld [vmem:[%s1 + $0x1f0] sm:$0xf]
  %v225 = vld [vmem:[%s1 + $0x1f4] sm:$0xf]
  %v226 = vld [vmem:[%s1 + $0x1f8] sm:$0xf]
  %v227 = vld [vmem:[%s1 + $0x1fc] sm:$0xf]
  %v228 = vld [vmem:[%s1 + $0x200] sm:$0xf]
  %v229 = vld [vmem:[%s1 + $0x204] sm:$0xf]
  %v230 = vld [vmem:[%s1 + $0x208] sm:$0xf]
  %v231 = vld [vmem:[%s1 + $0x20c] sm:$0xf]
  %v232 = vld [vmem:[%s1 + $0x210] sm:$0xf]
  %v233 = vld [vmem:[%s1 + $0x214] sm:$0xf]
  %v234 = vld [vmem:[%s1 + $0x218] sm:$0xf]
  %v235 = vld [vmem:[%s1 + $0x21c] sm:$0xf]
  %v236 = vld [vmem:[%s1 + $0x220] sm:$0xf]
  %v237 = vld [vmem:[%s1 + $0x224] sm:$0xf]
  %v238 = vld [vmem:[%s1 + $0x228] sm:$0xf]
  %v239 = vld [vmem:[%s1 + $0x22c] sm:$0xf]
  %v240 = vld [vmem:[%s1 + $0x230] sm:$0xf]
  %v241 = vld [vmem:[%s1 + $0x234] sm:$0xf]
  %v242 = vld [vmem:[%s1 + $0x238] sm:$0xf]
  %v243 = vld [vmem:[%s1 + $0x23c] sm:$0xf]
  %v244 = vld [vmem:[%s1 + $0x240] sm:$0xf]
  %v245 = vld [vmem:[%s1 + $0x244] sm:$0xf]
  %v246 = vld [vmem:[%s1 + $0x248] sm:$0xf]
  %v247 = vld [vmem:[%s1 + $0x24c] sm:$0xf]
  %v248 = vld [vmem:[%s1 + $0x250] sm:$0xf]
  %v249 = vld [vmem:[%s1 + $0x254] sm:$0xf]
  %v250 = vld [vmem:[%s1 + $0x258] sm:$0xf]
  %v251 = vld [vmem:[%s1 + $0x25c] sm:$0xf]
  %v252 = vld [vmem:[%s1 + $0x260] sm:$0xf]
  %v253 = vld [vmem:[%s1 + $0x264] sm:$0xf]
  %v254 = vld [vmem:[%s1 + $0x268] sm:$0xf]
  %v255 = vld [vmem:[%s1 + $0x26c] sm:$0xf]
  %v256 = vld [vmem:[%s1 + $0x270] sm:$0xf]
  %v257 = vld [vmem:[%s1 + $0x274] sm:$0xf]
  %v258 = vld [vmem:[%s1 + $0x278] sm:$0xf]
  %v259 = vld [vmem:[%s1 + $0x27c] sm:$0xf]
  %v260 = vld [vmem:[%s1 + $0x280] sm:$0xf]
  %v261 = vld [vmem:[%s1 + $0x284] sm:$0xf]
  %v262 = vld [vmem:[%s1 + $0x288] sm:$0xf]
  %v263 = vld [vmem:[%s1 + $0x28c] sm:$0xf]
  %v264 = vld [vmem:[%s1 + $0x290] sm:$0xf]
  %v265 = vld [vmem:[%s1 + $0x294] sm:$0xf]
  %v266 = vld [vmem:[%s1 + $0x298] sm:$0xf]
  %v267 = vld [vmem:[%s1 + $0x29c] sm:$0xf]
  %v268 = vld [vmem:[%s1 + $0x2a0] sm:$0xf]
  %v269 = vld [vmem:[%s1 + $0x2a4] sm:$0xf]
  %v270 = vld [vmem:[%s1 + $0x2a8] sm:$0xf]
  %v271 = vld [vmem:[%s1 + $0x2ac] sm:$0xf]
  %v272 = vld [vmem:[%s1 + $0x2b0] sm:$0xf]
  %v273 = vld [vmem:[%s1 + $0x2b4] sm:$0xf]
  %v274 = vld [vmem:[%s1 + $0x2b8] sm:$0xf]
  %v275 = vld [vmem:[%s1 + $0x2bc] sm:$0xf]
  %v276 = vld [vmem:[%s1 + $0x2c0] sm:$0xf]
  %v277 = vld [vmem:[%s1 + $0x2c4] sm:$0xf]
  %v278 = vld [vmem:[%s1 + $0x2c8] sm:$0xf]
  %v279 = vld [vmem:[%s1 + $0x2cc] sm:$0xf]
  %v280 = vld [vmem:[%s1 + $0x2d0] sm:$0xf]
  %v281 = vld [vmem:[%s1 + $0x2d4] sm:$0xf]
  %v282 = vld [vmem:[%s1 + $0x2d8] sm:$0xf]
  %v283 = vld [vmem:[%s1 + $0x2dc] sm:$0xf]
  %v284 = vld [vmem:[%s1 + $0x2e0] sm:$0xf]
  %v285 = vld [vmem:[%s1 + $0x2e4] sm:$0xf]
  %v286 = vld [vmem:[%s1 + $0x2e8] sm:$0xf]
  %v287 = vld [vmem:[%s1 + $0x2ec] sm:$0xf]
  %v288 = vld [vmem:[%s1 + $0x2f0] sm:$0xf]
  %v289 = vld [vmem:[%s1 + $0x2f4] sm:$0xf]
  %v290 = vld [vmem:[%s1 + $0x2f8] sm:$0xf]
  %v291 = vld [vmem:[%s1 + $0x2fc] sm:$0xf]
  %v292 = vld [vmem:[%s1 + $0x300] sm:$0xf]
  %v293 = vld [vmem:[%s1 + $0x304] sm:$0xf]
  %v294 = vld [vmem:[%s1 + $0x308] sm:$0xf]
  %v295 = vld [vmem:[%s1 + $0x30c] sm:$0xf]
  %v296 = vld [vmem:[%s1 + $0x310] sm:$0xf]
  %v297 = vld [vmem:[%s1 + $0x314] sm:$0xf]
  %v298 = vld [vmem:[%s1 + $0x318] sm:$0xf]
  %v299 = vld [vmem:[%s1 + $0x31c] sm:$0xf]
  %v300 = vld [vmem:[%s1 + $0x320] sm:$0xf]
  %v301 = vld [vmem:[%s1 + $0x324] sm:$0xf]
  %v302 = vld [vmem:[%s1 + $0x328] sm:$0xf]
  %v303 = vld [vmem:[%s1 + $0x32c] sm:$0xf]
  %v304 = vld [vmem:[%s1 + $0x330] sm:$0xf]
  %v305 = vld [vmem:[%s1 + $0x334] sm:$0xf]
  %v306 = vld [vmem:[%s1 + $0x338] sm:$0xf]
  %v307 = vld [vmem:[%s1 + $0x33c] sm:$0xf]
  %v308 = vld [vmem:[%s1 + $0x340] sm:$0xf]
  %v309 = vld [vmem:[%s1 + $0x344] sm:$0xf]
  %v310 = vld [vmem:[%s1 + $0x348] sm:$0xf]
  %v311 = vld [vmem:[%s1 + $0x34c] sm:$0xf]
  %v312 = vld [vmem:[%s1 + $0x350] sm:$0xf]
  %v313 = vld [vmem:[%s1 + $0x354] sm:$0xf]
  %v314 = vld [vmem:[%s1 + $0x358] sm:$0xf]
  %v315 = vld [vmem:[%s1 + $0x35c] sm:$0xf]
  %v316 = vld [vmem:[%s1 + $0x360] sm:$0xf]
  %v317 = vld [vmem:[%s1 + $0x364] sm:$0xf]
  %v318 = vld [vmem:[%s1 + $0x368] sm:$0xf]
  %v319 = vld [vmem:[%s1 + $0x36c] sm:$0xf]
  %v320 = vld [vmem:[%s1 + $0x370] sm:$0xf]
  %v321 = vld [vmem:[%s1 + $0x374] sm:$0xf]
  %v322 = vld [vmem:[%s1 + $0x378] sm:$0xf]
  %v323 = vld [vmem:[%s1 + $0x37c] sm:$0xf]
  %v324 = vld [vmem:[%s1 + $0x380] sm:$0xf]
  %v325 = vld [vmem:[%s1 + $0x384] sm:$0xf]
  %v326 = vld [vmem:[%s1 + $0x388] sm:$0xf]
  %v327 = vld [vmem:[%s1 + $0x38c] sm:$0xf]
  %v328 = vld [vmem:[%s1 + $0x390] sm:$0xf]
  %v329 = vld [vmem:[%s1 + $0x394] sm:$0xf]
  %v330 = vld [vmem:[%s1 + $0x398] sm:$0xf]
  %v331 = vld [vmem:[%s1 + $0x39c] sm:$0xf]
  %v332 = vld [vmem:[%s1 + $0x3a0] sm:$0xf]
  %v333 = vld [vmem:[%s1 + $0x3a4] sm:$0xf]
  %v334 = vld [vmem:[%s1 + $0x3a8] sm:$0xf]
  %v335 = vld [vmem:[%s1 + $0x3ac] sm:$0xf]
  %v336 = vld [vmem:[%s1 + $0x3b0] sm:$0xf]
  %v337 = vld [vmem:[%s1 + $0x3b4] sm:$0xf]
  %v338 = vld [vmem:[%s1 + $0x3b8] sm:$0xf]
  %v339 = vld [vmem:[%s1 + $0x3bc] sm:$0xf]
  %v340 = vld [vmem:[%s1 + $0x3c0] sm:$0xf]
  %v341 = vld [vmem:[%s1 + $0x3c4] sm:$0xf]
  %v342 = vld [vmem:[%s1 + $0x3c8] sm:$0xf]
  %v343 = vld [vmem:[%s1 + $0x3cc] sm:$0xf]
  %v344 = vld [vmem:[%s1 + $0x3d0] sm:$0xf]
  %v345 = vld [vmem:[%s1 + $0x3d4] sm:$0xf]
  %v346 = vld [vmem:[%s1 + $0x3d8] sm:$0xf]
  %v347 = vld [vmem:[%s1 + $0x3dc] sm:$0xf]
  %v348 = vld [vmem:[%s1 + $0x3e0] sm:$0xf]
  %v349 = vld [vmem:[%s1 + $0x3e4] sm:$0xf]
  %v350 = vld [vmem:[%s1 + $0x3e8] sm:$0xf]
  %v351 = vld [vmem:[%s1 + $0x3ec] sm:$0xf]
  %v352 = vld [vmem:[%s1 + $0x3f0] sm:$0xf]
  %v353 = vld [vmem:[%s1 + $0x3f4] sm:$0xf]
  %v354 = vld [vmem:[%s1 + $0x3f8] sm:$0xf]
  %v355 = vld [vmem:[%s1 + $0x3fc] sm:$0xf]
  %v356 = vld [vmem:[%s1 + $0x400] sm:$0xf]
  %v357 = vld [vmem:[%s1 + $0x404] sm:$0xf]
  %v358 = vld [vmem:[%s1 + $0x408] sm:$0xf]
  %v359 = vld [vmem:[%s1 + $0x40c] sm:$0xf]
  %v360 = vld [vmem:[%s1 + $0x410] sm:$0xf]
  %v361 = vld [vmem:[%s1 + $0x414] sm:$0xf]
  %v362 = vld [vmem:[%s1 + $0x418] sm:$0xf]
  %v363 = vld [vmem:[%s1 + $0x41c] sm:$0xf]
  %v364 = vld [vmem:[%s1 + $0x420] sm:$0xf]
  %v365 = vld [vmem:[%s1 + $0x424] sm:$0xf]
  %v366 = vld [vmem:[%s1 + $0x428] sm:$0xf]
  %v367 = vld [vmem:[%s1 + $0x42c] sm:$0xf]
  %v368 = vld [vmem:[%s1 + $0x430] sm:$0xf]
  %v369 = vld [vmem:[%s1 + $0x434] sm:$0xf]
  %v370 = vld [vmem:[%s1 + $0x438] sm:$0xf]
  %v371 = vld [vmem:[%s1 + $0x43c] sm:$0xf]
  %v372 = vld [vmem:[%s1 + $0x440] sm:$0xf]
  %v373 = vld [vmem:[%s1 + $0x444] sm:$0xf]
  %v374 = vld [vmem:[%s1 + $0x448] sm:$0xf]
  %v375 = vld [vmem:[%s1 + $0x44c] sm:$0xf]
  %v376 = vld [vmem:[%s1 + $0x450] sm:$0xf]
  %v377 = vld [vmem:[%s1 + $0x454] sm:$0xf]
  %v378 = vld [vmem:[%s1 + $0x458] sm:$0xf]
  %v379 = vld [vmem:[%s1 + $0x45c] sm:$0xf]
  %v380 = vld [vmem:[%s1 + $0x460] sm:$0xf]
  %v381 = vld [vmem:[%s1 + $0x464] sm:$0xf]
  %v382 = vld [vmem:[%s1 + $0x468] sm:$0xf]
  %v383 = vld [vmem:[%s1 + $0x46c] sm:$0xf]
  %v384 = vld [vmem:[%s1 + $0x470] sm:$0xf]
  %v385 = vld [vmem:[%s1 + $0x474] sm:$0xf]
  %v386 = vld [vmem:[%s1 + $0x478] sm:$0xf]
  %v387 = vld [vmem:[%s1 + $0x47c] sm:$0xf]
  %v388 = vld [vmem:[%s1 + $0x480] sm:$0xf]
  %v389 = vld [vmem:[%s1 + $0x484] sm:$0xf]
  %v390 = vld [vmem:[%s1 + $0x488] sm:$0xf]
  %v391 = vld [vmem:[%s1 + $0x48c] sm:$0xf]
  %v392 = vld [vmem:[%s1 + $0x490] sm:$0xf]
  %v393 = vld [vmem:[%s1 + $0x494] sm:$0xf]
  %v394 = vld [vmem:[%s1 + $0x498] sm:$0xf]
  %v395 = vld [vmem:[%s1 + $0x49c] sm:$0xf]
  %v396 = vld [vmem:[%s1 + $0x4a0] sm:$0xf]
  %v397 = vld [vmem:[%s1 + $0x4a4] sm:$0xf]
  %v398 = vld [vmem:[%s1 + $0x4a8] sm:$0xf]
  %v399 = vld [vmem:[%s1 + $0x4ac] sm:$0xf]
  %v400 = vld [vmem:[%s1 + $0x4b0] sm:$0xf]
  %v401 = vld [vmem:[%s1 + $0x4b4] sm:$0xf]
  %v402 = vld [vmem:[%s1 + $0x4b8] sm:$0xf]
  %v403 = vld [vmem:[%s1 + $0x4bc] sm:$0xf]
  %v404 = vld [vmem:[%s1 + $0x4c0] sm:$0xf]
  %v405 = vld [vmem:[%s1 + $0x4c4] sm:$0xf]
  %v406 = vld [vmem:[%s1 + $0x4c8] sm:$0xf]
  %v407 = vld [vmem:[%s1 + $0x4cc] sm:$0xf]
  %v408 = vld [vmem:[%s1 + $0x4d0] sm:$0xf]
  %v409 = vld [vmem:[%s1 + $0x4d4] sm:$0xf]
  %v410 = vld [vmem:[%s1 + $0x4d8] sm:$0xf]
  %v411 = vld [vmem:[%s1 + $0x4dc] sm:$0xf]
  %v412 = vld [vmem:[%s1 + $0x4e0] sm:$0xf]
  %v413 = vld [vmem:[%s1 + $0x4e4] sm:$0xf]
  %v414 = vld [vmem:[%s1 + $0x4e8] sm:$0xf]
  %v415 = vld [vmem:[%s1 + $0x4ec] sm:$0xf]
  %v416 = vld [vmem:[%s1 + $0x4f0] sm:$0xf]
  %v417 = vld [vmem:[%s1 + $0x4f4] sm:$0xf]
  %v418 = vld [vmem:[%s1 + $0x4f8] sm:$0xf]
  %v419 = vld [vmem:[%s1 + $0x4fc] sm:$0xf]
  %v420 = vld [vmem:[%s1 + $0x500] sm:$0xf]
  %v421 = vld [vmem:[%s1 + $0x504] sm:$0xf]
  %v422 = vld [vmem:[%s1 + $0x508] sm:$0xf]
  %v423 = vld [vmem:[%s1 + $0x50c] sm:$0xf]
  %v424 = vld [vmem:[%s1 + $0x510] sm:$0xf]
  %v425 = vld [vmem:[%s1 + $0x514] sm:$0xf]
  %v426 = vld [vmem:[%s1 + $0x518] sm:$0xf]
  %v427 = vld [vmem:[%s1 + $0x51c] sm:$0xf]
  %v428 = vld [vmem:[%s1 + $0x520] sm:$0xf]
  %v429 = vld [vmem:[%s1 + $0x524] sm:$0xf]
  %v430 = vld [vmem:[%s1 + $0x528] sm:$0xf]
  %v431 = vld [vmem:[%s1 + $0x52c] sm:$0xf]
  %v432 = vld [vmem:[%s1 + $0x530] sm:$0xf]
  %v433 = vld [vmem:[%s1 + $0x534] sm:$0xf]
  %v434 = vld [vmem:[%s1 + $0x538] sm:$0xf]
  %v435 = vld [vmem:[%s1 + $0x53c] sm:$0xf]
  %v436 = vld [vmem:[%s1 + $0x540] sm:$0xf]
  %v437 = vld [vmem:[%s1 + $0x544] sm:$0xf]
  %v438 = vld [vmem:[%s1 + $0x548] sm:$0xf]
  %v439 = vld [vmem:[%s1 + $0x54c] sm:$0xf]
  %v440 = vld [vmem:[%s1 + $0x550] sm:$0xf]
  %v441 = vld [vmem:[%s1 + $0x554] sm:$0xf]
  %v442 = vld [vmem:[%s1 + $0x558] sm:$0xf]
  %v443 = vld [vmem:[%s1 + $0x55c] sm:$0xf]
  %v444 = vld [vmem:[%s1 + $0x560] sm:$0xf]
  %v445 = vld [vmem:[%s1 + $0x564] sm:$0xf]
  %v446 = vld [vmem:[%s1 + $0x568] sm:$0xf]
  %v447 = vld [vmem:[%s1 + $0x56c] sm:$0xf]
  %v448 = vld [vmem:[%s1 + $0x570] sm:$0xf]
  %v449 = vld [vmem:[%s1 + $0x574] sm:$0xf]
  %v450 = vld [vmem:[%s1 + $0x578] sm:$0xf]
  %v451 = vld [vmem:[%s1 + $0x57c] sm:$0xf]
  %v452 = vld [vmem:[%s1 + $0x580] sm:$0xf]
  %v453 = vld [vmem:[%s1 + $0x584] sm:$0xf]
  %v454 = vld [vmem:[%s1 + $0x588] sm:$0xf]
  %v455 = vld [vmem:[%s1 + $0x58c] sm:$0xf]
  %v456 = vld [vmem:[%s1 + $0x590] sm:$0xf]
  %v457 = vld [vmem:[%s1 + $0x594] sm:$0xf]
  %v458 = vld [vmem:[%s1 + $0x598] sm:$0xf]
  %v459 = vld [vmem:[%s1 + $0x59c] sm:$0xf]
  %v460 = vld [vmem:[%s1 + $0x5a0] sm:$0xf]
  %v461 = vld [vmem:[%s1 + $0x5a4] sm:$0xf]
  %v462 = vld [vmem:[%s1 + $0x5a8] sm:$0xf]
  %v463 = vld [vmem:[%s1 + $0x5ac] sm:$0xf]
  %v464 = vld [vmem:[%s1 + $0x5b0] sm:$0xf]
  %v465 = vld [vmem:[%s1 + $0x5b4] sm:$0xf]
  %v466 = vld [vmem:[%s1 + $0x5b8] sm:$0xf]
  %v467 = vld [vmem:[%s1 + $0x5bc] sm:$0xf]
  %v468 = vld [vmem:[%s1 + $0x5c0] sm:$0xf]
  %v469 = vld [vmem:[%s1 + $0x5c4] sm:$0xf]
  %v470 = vld [vmem:[%s1 + $0x5c8] sm:$0xf]
  %v471 = vld [vmem:[%s1 + $0x5cc] sm:$0xf]
  %v472 = vld [vmem:[%s1 + $0x5d0] sm:$0xf]
  %v473 = vld [vmem:[%s1 + $0x5d4] sm:$0xf]
  %v474 = vld [vmem:[%s1 + $0x5d8] sm:$0xf]
  %v475 = vld [vmem:[%s1 + $0x5dc] sm:$0xf]
  %v476 = vld [vmem:[%s1 + $0x5e0] sm:$0xf]
  %v477 = vld [vmem:[%s1 + $0x5e4] sm:$0xf]
  %v478 = vld [vmem:[%s1 + $0x5e8] sm:$0xf]
  %v479 = vld [vmem:[%s1 + $0x5ec] sm:$0xf]
  %v480 = vld [vmem:[%s1 + $0x5f0] sm:$0xf]
  %v481 = vld [vmem:[%s1 + $0x5f4] sm:$0xf]
  %v482 = vld [vmem:[%s1 + $0x5f8] sm:$0xf]
  %v483 = vld [vmem:[%s1 + $0x5fc] sm:$0xf]
  %v484 = vld [vmem:[%s1 + $0x600] sm:$0xf]
  %v485 = vld [vmem:[%s1 + $0x604] sm:$0xf]
  %v486 = vld [vmem:[%s1 + $0x608] sm:$0xf]
  %v487 = vld [vmem:[%s1 + $0x60c] sm:$0xf]
  %v488 = vld [vmem:[%s1 + $0x610] sm:$0xf]
  %v489 = vld [vmem:[%s1 + $0x614] sm:$0xf]
  %v490 = vld [vmem:[%s1 + $0x618] sm:$0xf]
  %v491 = vld [vmem:[%s1 + $0x61c] sm:$0xf]
  %v492 = vld [vmem:[%s1 + $0x620] sm:$0xf]
  %v493 = vld [vmem:[%s1 + $0x624] sm:$0xf]
  %v494 = vld [vmem:[%s1 + $0x628] sm:$0xf]
  %v495 = vld [vmem:[%s1 + $0x62c] sm:$0xf]
  %v496 = vld [vmem:[%s1 + $0x630] sm:$0xf]
  %v497 = vld [vmem:[%s1 + $0x634] sm:$0xf]
  %v498 = vld [vmem:[%s1 + $0x638] sm:$0xf]
  %v499 = vld [vmem:[%s1 + $0x63c] sm:$0xf]
  %v500 = vld [vmem:[%s1 + $0x640] sm:$0xf]
  %v501 = vld [vmem:[%s1 + $0x644] sm:$0xf]
  %v502 = vld [vmem:[%s1 + $0x648] sm:$0xf]
  %v503 = vld [vmem:[%s1 + $0x64c] sm:$0xf]
  %v504 = vld [vmem:[%s1 + $0x650] sm:$0xf]
  %v505 = vld [vmem:[%s1 + $0x654] sm:$0xf]
  %v506 = vld [vmem:[%s1 + $0x658] sm:$0xf]
  %v507 = vld [vmem:[%s1 + $0x65c] sm:$0xf]
  %v508 = vld [vmem:[%s1 + $0x660] sm:$0xf]
  %v509 = vld [vmem:[%s1 + $0x664] sm:$0xf]
  %v510 = vld [vmem:[%s1 + $0x668] sm:$0xf]
  %v511 = vld [vmem:[%s1 + $0x66c] sm:$0xf]
  %v512 = vld [vmem:[%s1 + $0x670] sm:$0xf]
  %v513 = vld [vmem:[%s1 + $0x674] sm:$0xf]
  %v514 = vld [vmem:[%s1 + $0x678] sm:$0xf]
  %v515 = vld [vmem:[%s1 + $0x67c] sm:$0xf]
  %v516 = vld [vmem:[%s1 + $0x680] sm:$0xf]
  %v517 = vld [vmem:[%s1 + $0x684] sm:$0xf]
  %v518 = vld [vmem:[%s1 + $0x688] sm:$0xf]
  %v519 = vld [vmem:[%s1 + $0x68c] sm:$0xf]
  %v520 = vld [vmem:[%s1 + $0x690] sm:$0xf]
  %v521 = vld [vmem:[%s1 + $0x694] sm:$0xf]
  %v522 = vld [vmem:[%s1 + $0x698] sm:$0xf]
  %v523 = vld [vmem:[%s1 + $0x69c] sm:$0xf]
  %v524 = vld [vmem:[%s1 + $0x6a0] sm:$0xf]
  %v525 = vld [vmem:[%s1 + $0x6a4] sm:$0xf]
  %v526 = vld [vmem:[%s1 + $0x6a8] sm:$0xf]
  %v527 = vld [vmem:[%s1 + $0x6ac] sm:$0xf]
  %v528 = vld [vmem:[%s1 + $0x6b0] sm:$0xf]
  %v529 = vld [vmem:[%s1 + $0x6b4] sm:$0xf]
  %v530 = vld [vmem:[%s1 + $0x6b8] sm:$0xf]
  %v531 = vld [vmem:[%s1 + $0x6bc] sm:$0xf]
  %v532 = vld [vmem:[%s1 + $0x6c0] sm:$0xf]
  %v533 = vld [vmem:[%s1 + $0x6c4] sm:$0xf]
  %v534 = vld [vmem:[%s1 + $0x6c8] sm:$0xf]
  %v535 = vld [vmem:[%s1 + $0x6cc] sm:$0xf]
  %v536 = vld [vmem:[%s1 + $0x6d0] sm:$0xf]
  %v537 = vld [vmem:[%s1 + $0x6d4] sm:$0xf]
  %v538 = vld [vmem:[%s1 + $0x6d8] sm:$0xf]
  %v539 = vld [vmem:[%s1 + $0x6dc] sm:$0xf]
  %v540 = vld [vmem:[%s1 + $0x6e0] sm:$0xf]
  %v541 = vld [vmem:[%s1 + $0x6e4] sm:$0xf]
  %v542 = vld [vmem:[%s1 + $0x6e8] sm:$0xf]
  %v543 = vld [vmem:[%s1 + $0x6ec] sm:$0xf]
  %v544 = vld [vmem:[%s1 + $0x6f0] sm:$0xf]
  %v545 = vld [vmem:[%s1 + $0x6f4] sm:$0xf]
  %v546 = vld [vmem:[%s1 + $0x6f8] sm:$0xf]
  %v547 = vld [vmem:[%s1 + $0x6fc] sm:$0xf]
  %v548 = vld [vmem:[%s1 + $0x700] sm:$0xf]
  %v549 = vld [vmem:[%s1 + $0x704] sm:$0xf]
  %v550 = vld [vmem:[%s1 + $0x708] sm:$0xf]
  %v551 = vld [vmem:[%s1 + $0x70c] sm:$0xf]
  %v552 = vld [vmem:[%s1 + $0x710] sm:$0xf]
  %v553 = vld [vmem:[%s1 + $0x714] sm:$0xf]
  %v554 = vld [vmem:[%s1 + $0x718] sm:$0xf]
  %v555 = vld [vmem:[%s1 + $0x71c] sm:$0xf]
  %v556 = vld [vmem:[%s1 + $0x720] sm:$0xf]
  %v557 = vld [vmem:[%s1 + $0x724] sm:$0xf]
  %v558 = vld [vmem:[%s1 + $0x728] sm:$0xf]
  %v559 = vld [vmem:[%s1 + $0x72c] sm:$0xf]
  %v560 = vld [vmem:[%s1 + $0x730] sm:$0xf]
  %v561 = vld [vmem:[%s1 + $0x734] sm:$0xf]
  %v562 = vld [vmem:[%s1 + $0x738] sm:$0xf]
  %v563 = vld [vmem:[%s1 + $0x73c] sm:$0xf]
  %v564 = vld [vmem:[%s1 + $0x740] sm:$0xf]
  %v565 = vld [vmem:[%s1 + $0x744] sm:$0xf]
  %v566 = vld [vmem:[%s1 + $0x748] sm:$0xf]
  %v567 = vld [vmem:[%s1 + $0x74c] sm:$0xf]
  %v568 = vld [vmem:[%s1 + $0x750] sm:$0xf]
  %v569 = vld [vmem:[%s1 + $0x754] sm:$0xf]
  %v570 = vld [vmem:[%s1 + $0x758] sm:$0xf]
  %v571 = vld [vmem:[%s1 + $0x75c] sm:$0xf]
  %v572 = vld [vmem:[%s1 + $0x760] sm:$0xf]
  %v573 = vld [vmem:[%s1 + $0x764] sm:$0xf]
  %v574 = vld [vmem:[%s1 + $0x768] sm:$0xf]
  %v575 = vld [vmem:[%s1 + $0x76c] sm:$0xf]
  %v576 = vld [vmem:[%s1 + $0x770] sm:$0xf]
  %v577 = vld [vmem:[%s1 + $0x774] sm:$0xf]
  %v578 = vld [vmem:[%s1 + $0x778] sm:$0xf]
  %v579 = vld [vmem:[%s1 + $0x77c] sm:$0xf]
  %v580 = vld [vmem:[%s1 + $0x780] sm:$0xf]
  %v581 = vld [vmem:[%s1 + $0x784] sm:$0xf]
  %v582 = vld [vmem:[%s1 + $0x788] sm:$0xf]
  %v583 = vld [vmem:[%s1 + $0x78c] sm:$0xf]
  %v584 = vld [vmem:[%s1 + $0x790] sm:$0xf]
  %v585 = vld [vmem:[%s1 + $0x794] sm:$0xf]
  %v586 = vld [vmem:[%s1 + $0x798] sm:$0xf]
  %v587 = vld [vmem:[%s1 + $0x79c] sm:$0xf]
  %v588 = vld [vmem:[%s1 + $0x7a0] sm:$0xf]
  %v589 = vld [vmem:[%s1 + $0x7a4] sm:$0xf]
  %v590 = vld [vmem:[%s1 + $0x7a8] sm:$0xf]
  %v591 = vld [vmem:[%s1 + $0x7ac] sm:$0xf]
  %v592 = vld [vmem:[%s1 + $0x7b0] sm:$0xf]
  %v593 = vld [vmem:[%s1 + $0x7b4] sm:$0xf]
  %v594 = vld [vmem:[%s1 + $0x7b8] sm:$0xf]
  %v595 = vld [vmem:[%s1 + $0x7bc] sm:$0xf]
  %v596 = vld [vmem:[%s1 + $0x7c0] sm:$0xf]
  %v597 = vld [vmem:[%s1 + $0x7c4] sm:$0xf]
  %v598 = vld [vmem:[%s1 + $0x7c8] sm:$0xf]
  %v599 = vld [vmem:[%s1 + $0x7cc] sm:$0xf]
  %v600 = vld [vmem:[%s1 + $0x7d0] sm:$0xf]
  %v601 = vld [vmem:[%s1 + $0x7d4] sm:$0xf]
  %v602 = vld [vmem:[%s1 + $0x7d8] sm:$0xf]
  %v603 = vld [vmem:[%s1 + $0x7dc] sm:$0xf]
  %v604 = vld [vmem:[%s1 + $0x7e0] sm:$0xf]
  %v605 = vld [vmem:[%s1 + $0x7e4] sm:$0xf]
  %v606 = vld [vmem:[%s1 + $0x7e8] sm:$0xf]
  %v607 = vld [vmem:[%s1 + $0x7ec] sm:$0xf]
  %v608 = vld [vmem:[%s1 + $0x7f0] sm:$0xf]
  %v609 = vld [vmem:[%s1 + $0x7f4] sm:$0xf]
  %v610 = vld [vmem:[%s1 + $0x7f8] sm:$0xf]
  %v611 = vld [vmem:[%s1 + $0x7fc] sm:$0xf]
  %v612 = vld [vmem:[%s1 + $0x800] sm:$0xf]
  %v613 = vld [vmem:[%s1 + $0x804] sm:$0xf]
  %v614 = vld [vmem:[%s1 + $0x808] sm:$0xf]
  %v615 = vld [vmem:[%s1 + $0x80c] sm:$0xf]
  %v616 = vld [vmem:[%s1 + $0x810] sm:$0xf]
  %v617 = vld [vmem:[%s1 + $0x814] sm:$0xf]
  %v618 = vld [vmem:[%s1 + $0x818] sm:$0xf]
  %v619 = vld [vmem:[%s1 + $0x81c] sm:$0xf]
  %v620 = vld [vmem:[%s1 + $0x820] sm:$0xf]
  %v621 = vld [vmem:[%s1 + $0x824] sm:$0xf]
  %v622 = vld [vmem:[%s1 + $0x828] sm:$0xf]
  %v623 = vld [vmem:[%s1 + $0x82c] sm:$0xf]
  %v624 = vld [vmem:[%s1 + $0x830] sm:$0xf]
  %v625 = vld [vmem:[%s1 + $0x834] sm:$0xf]
  %v626 = vld [vmem:[%s1 + $0x838] sm:$0xf]
  %v627 = vld [vmem:[%s1 + $0x83c] sm:$0xf]
  %v628 = vld [vmem:[%s1 + $0x840] sm:$0xf]
  %v629 = vld [vmem:[%s1 + $0x844] sm:$0xf]
  %v630 = vld [vmem:[%s1 + $0x848] sm:$0xf]
  %v631 = vld [vmem:[%s1 + $0x84c] sm:$0xf]
  %v632 = vld [vmem:[%s1 + $0x850] sm:$0xf]
  %v633 = vld [vmem:[%s1 + $0x854] sm:$0xf]
  %v634 = vld [vmem:[%s1 + $0x858] sm:$0xf]
  %v635 = vld [vmem:[%s1 + $0x85c] sm:$0xf]
  %v636 = vld [vmem:[%s1 + $0x860] sm:$0xf]
  %v637 = vld [vmem:[%s1 + $0x864] sm:$0xf]
  %v638 = vld [vmem:[%s1 + $0x868] sm:$0xf]
  %v639 = vld [vmem:[%s1 + $0x86c] sm:$0xf]
  %v640 = vld [vmem:[%s1 + $0x870] sm:$0xf]
  %v641 = vld [vmem:[%s1 + $0x874] sm:$0xf]
  %v642 = vld [vmem:[%s1 + $0x878] sm:$0xf]
  %v643 = vld [vmem:[%s1 + $0x87c] sm:$0xf]
  %v644 = vld [vmem:[%s1 + $0x880] sm:$0xf]
  %v645 = vld [vmem:[%s1 + $0x884] sm:$0xf]
  %v646 = vld [vmem:[%s1 + $0x888] sm:$0xf]
  %v647 = vld [vmem:[%s1 + $0x88c] sm:$0xf]
  %v648 = vld [vmem:[%s1 + $0x890] sm:$0xf]
  %v649 = vld [vmem:[%s1 + $0x894] sm:$0xf]
  %v650 = vld [vmem:[%s1 + $0x898] sm:$0xf]
  %v651 = vld [vmem:[%s1 + $0x89c] sm:$0xf]
  %v652 = vld [vmem:[%s1 + $0x8a0] sm:$0xf]
  %v653 = vld [vmem:[%s1 + $0x8a4] sm:$0xf]
  %v654 = vld [vmem:[%s1 + $0x8a8] sm:$0xf]
  %v655 = vld [vmem:[%s1 + $0x8ac] sm:$0xf]
  %v656 = vld [vmem:[%s1 + $0x8b0] sm:$0xf]
  %v657 = vld [vmem:[%s1 + $0x8b4] sm:$0xf]
  %v658 = vld [vmem:[%s1 + $0x8b8] sm:$0xf]
  %v659 = vld [vmem:[%s1 + $0x8bc] sm:$0xf]
  %v660 = vld [vmem:[%s1 + $0x8c0] sm:$0xf]
  %v661 = vld [vmem:[%s1 + $0x8c4] sm:$0xf]
  %v662 = vld [vmem:[%s1 + $0x8c8] sm:$0xf]
  %v663 = vld [vmem:[%s1 + $0x8cc] sm:$0xf]
  %v664 = vld [vmem:[%s1 + $0x8d0] sm:$0xf]
  %v665 = vld [vmem:[%s1 + $0x8d4] sm:$0xf]
  %v666 = vld [vmem:[%s1 + $0x8d8] sm:$0xf]
  %v667 = vld [vmem:[%s1 + $0x8dc] sm:$0xf]
  %v668 = vld [vmem:[%s1 + $0x8e0] sm:$0xf]
  %v669 = vld [vmem:[%s1 + $0x8e4] sm:$0xf]
  %v670 = vld [vmem:[%s1 + $0x8e8] sm:$0xf]
  %v671 = vld [vmem:[%s1 + $0x8ec] sm:$0xf]
  %v672 = vld [vmem:[%s1 + $0x8f0] sm:$0xf]
  %v673 = vld [vmem:[%s1 + $0x8f4] sm:$0xf]
  %v674 = vld [vmem:[%s1 + $0x8f8] sm:$0xf]
  %v675 = vld [vmem:[%s1 + $0x8fc] sm:$0xf]
  %v676 = vld [vmem:[%s1 + $0x900] sm:$0xf]
  %v677 = vld [vmem:[%s1 + $0x904] sm:$0xf]
  %v678 = vld [vmem:[%s1 + $0x908] sm:$0xf]
  %v679 = vld [vmem:[%s1 + $0x90c] sm:$0xf]
  %v680 = vld [vmem:[%s1 + $0x910] sm:$0xf]
  %v681 = vld [vmem:[%s1 + $0x914] sm:$0xf]
  %v682 = vld [vmem:[%s1 + $0x918] sm:$0xf]
  %v683 = vld [vmem:[%s1 + $0x91c] sm:$0xf]
  %v684 = vld [vmem:[%s1 + $0x920] sm:$0xf]
  %v685 = vld [vmem:[%s1 + $0x924] sm:$0xf]
  %v686 = vld [vmem:[%s1 + $0x928] sm:$0xf]
  %v687 = vld [vmem:[%s1 + $0x92c] sm:$0xf]
  %v688 = vld [vmem:[%s1 + $0x930] sm:$0xf]
  %v689 = vld [vmem:[%s1 + $0x934] sm:$0xf]
  %v690 = vld [vmem:[%s1 + $0x938] sm:$0xf]
  %v691 = vld [vmem:[%s1 + $0x93c] sm:$0xf]
  %v692 = vld [vmem:[%s1 + $0x940] sm:$0xf]
  %v693 = vld [vmem:[%s1 + $0x944] sm:$0xf]
  %v694 = vld [vmem:[%s1 + $0x948] sm:$0xf]
  %v695 = vld [vmem:[%s1 + $0x94c] sm:$0xf]
  %v696 = vld [vmem:[%s1 + $0x950] sm:$0xf]
  %v697 = vld [vmem:[%s1 + $0x954] sm:$0xf]
  %v698 = vld [vmem:[%s1 + $0x958] sm:$0xf]
  %v699 = vld [vmem:[%s1 + $0x95c] sm:$0xf]
  %v700 = vld [vmem:[%s1 + $0x960] sm:$0xf]
  %v701 = vld [vmem:[%s1 + $0x964] sm:$0xf]
  %v702 = vld [vmem:[%s1 + $0x968] sm:$0xf]
  %v703 = vld [vmem:[%s1 + $0x96c] sm:$0xf]
  %v704 = vld [vmem:[%s1 + $0x970] sm:$0xf]
  %v705 = vld [vmem:[%s1 + $0x974] sm:$0xf]
  %v706 = vld [vmem:[%s1 + $0x978] sm:$0xf]
  %v707 = vld [vmem:[%s1 + $0x97c] sm:$0xf]
  %v708 = vld [vmem:[%s1 + $0x980] sm:$0xf]
  %v709 = vld [vmem:[%s1 + $0x984] sm:$0xf]
  %v710 = vld [vmem:[%s1 + $0x988] sm:$0xf]
  %v711 = vld [vmem:[%s1 + $0x98c] sm:$0xf]
  %v712 = vld [vmem:[%s1 + $0x990] sm:$0xf]
  %v713 = vld [vmem:[%s1 + $0x994] sm:$0xf]
  %v714 = vld [vmem:[%s1 + $0x998] sm:$0xf]
  %v715 = vld [vmem:[%s1 + $0x99c] sm:$0xf]
  %v716 = vld [vmem:[%s1 + $0x9a0] sm:$0xf]
  %v717 = vld [vmem:[%s1 + $0x9a4] sm:$0xf]
  %v718 = vld [vmem:[%s1 + $0x9a8] sm:$0xf]
  %v719 = vld [vmem:[%s1 + $0x9ac] sm:$0xf]
  %v720 = vld [vmem:[%s1 + $0x9b0] sm:$0xf]
  %v721 = vld [vmem:[%s1 + $0x9b4] sm:$0xf]
  %v722 = vld [vmem:[%s1 + $0x9b8] sm:$0xf]
  %v723 = vld [vmem:[%s1 + $0x9bc] sm:$0xf]
  %v724 = vld [vmem:[%s1 + $0x9c0] sm:$0xf]
  %v725 = vld [vmem:[%s1 + $0x9c4] sm:$0xf]
  %v726 = vld [vmem:[%s1 + $0x9c8] sm:$0xf]
  %v727 = vld [vmem:[%s1 + $0x9cc] sm:$0xf]
  %v728 = vld [vmem:[%s1 + $0x9d0] sm:$0xf]
  %v729 = vld [vmem:[%s1 + $0x9d4] sm:$0xf]
  %v730 = vld [vmem:[%s1 + $0x9d8] sm:$0xf]
  %v731 = vld [vmem:[%s1 + $0x9dc] sm:$0xf]
  %v732 = vld [vmem:[%s1 + $0x9e0] sm:$0xf]
  %v733 = vld [vmem:[%s1 + $0x9e4] sm:$0xf]
  %v734 = vld [vmem:[%s1 + $0x9e8] sm:$0xf]
  %v735 = vld [vmem:[%s1 + $0x9ec] sm:$0xf]
  %v736 = vld [vmem:[%s1 + $0x9f0] sm:$0xf]
  %v737 = vld [vmem:[%s1 + $0x9f4] sm:$0xf]
  %v738 = vld [vmem:[%s1 + $0x9f8] sm:$0xf]
  %v739 = vld [vmem:[%s1 + $0x9fc] sm:$0xf]
  %v740 = vld [vmem:[%s1 + $0xa00] sm:$0xf]
  %v741 = vld [vmem:[%s1 + $0xa04] sm:$0xf]
  %v742 = vld [vmem:[%s1 + $0xa08] sm:$0xf]
  %v743 = vld [vmem:[%s1 + $0xa0c] sm:$0xf]
  %v744 = vld [vmem:[%s1 + $0xa10] sm:$0xf]
  %v745 = vld [vmem:[%s1 + $0xa14] sm:$0xf]
  %v746 = vld [vmem:[%s1 + $0xa18] sm:$0xf]
  %v747 = vld [vmem:[%s1 + $0xa1c] sm:$0xf]
  %v748 = vld [vmem:[%s1 + $0xa20] sm:$0xf]
  %v749 = vld [vmem:[%s1 + $0xa24] sm:$0xf]
  %v750 = vld [vmem:[%s1 + $0xa28] sm:$0xf]
  %v751 = vld [vmem:[%s1 + $0xa2c] sm:$0xf]
  %v752 = vld [vmem:[%s1 + $0xa30] sm:$0xf]
  %v753 = vld [vmem:[%s1 + $0xa34] sm:$0xf]
  %v754 = vld [vmem:[%s1 + $0xa38] sm:$0xf]
  %v755 = vld [vmem:[%s1 + $0xa3c] sm:$0xf]
  %v756 = vld [vmem:[%s1 + $0xa40] sm:$0xf]
  %v757 = vld [vmem:[%s1 + $0xa44] sm:$0xf]
  %v758 = vld [vmem:[%s1 + $0xa48] sm:$0xf]
  %v759 = vld [vmem:[%s1 + $0xa4c] sm:$0xf]
  %v760 = vld [vmem:[%s1 + $0xa50] sm:$0xf]
  %v761 = vld [vmem:[%s1 + $0xa54] sm:$0xf]
  %v762 = vld [vmem:[%s1 + $0xa58] sm:$0xf]
  %v763 = vld [vmem:[%s1 + $0xa5c] sm:$0xf]
  %v764 = vld [vmem:[%s1 + $0xa60] sm:$0xf]
  %v765 = vld [vmem:[%s1 + $0xa64] sm:$0xf]
  %v766 = vld [vmem:[%s1 + $0xa68] sm:$0xf]
  %v767 = vld [vmem:[%s1 + $0xa6c] sm:$0xf]
  %v768 = vld [vmem:[%s1 + $0xa70] sm:$0xf]
  %v769 = vld [vmem:[%s1 + $0xa74] sm:$0xf]
  %v770 = vld [vmem:[%s1 + $0xa78] sm:$0xf]
  %v771 = vld [vmem:[%s1 + $0xa7c] sm:$0xf]
  %v772 = vld [vmem:[%s1 + $0xa80] sm:$0xf]
  %v773 = vld [vmem:[%s1 + $0xa84] sm:$0xf]
  %v774 = vld [vmem:[%s1 + $0xa88] sm:$0xf]
  %v775 = vld [vmem:[%s1 + $0xa8c] sm:$0xf]
  %v776 = vld [vmem:[%s1 + $0xa90] sm:$0xf]
  %v777 = vld [vmem:[%s1 + $0xa94] sm:$0xf]
  %v778 = vld [vmem:[%s1 + $0xa98] sm:$0xf]
  %v779 = vld [vmem:[%s1 + $0xa9c] sm:$0xf]
  %v780 = vld [vmem:[%s1 + $0xaa0] sm:$0xf]
  %v781 = vld [vmem:[%s1 + $0xaa4] sm:$0xf]
  %v782 = vld [vmem:[%s1 + $0xaa8] sm:$0xf]
  %v783 = vld [vmem:[%s1 + $0xaac] sm:$0xf]
  %v784 = vld [vmem:[%s1 + $0xab0] sm:$0xf]
  %v785 = vld [vmem:[%s1 + $0xab4] sm:$0xf]
  %v786 = vld [vmem:[%s1 + $0xab8] sm:$0xf]
  %v787 = vld [vmem:[%s1 + $0xabc] sm:$0xf]
  %v788 = vld [vmem:[%s1 + $0xac0] sm:$0xf]
  %v789 = vld [vmem:[%s1 + $0xac4] sm:$0xf]
  %v790 = vld [vmem:[%s1 + $0xac8] sm:$0xf]
  %v791 = vld [vmem:[%s1 + $0xacc] sm:$0xf]
  %v792 = vld [vmem:[%s1 + $0xad0] sm:$0xf]
  %v793 = vld [vmem:[%s1 + $0xad4] sm:$0xf]
  %v794 = vld [vmem:[%s1 + $0xad8] sm:$0xf]
  %v795 = vld [vmem:[%s1 + $0xadc] sm:$0xf]
  %v796 = vld [vmem:[%s1 + $0xae0] sm:$0xf]
  %v797 = vld [vmem:[%s1 + $0xae4] sm:$0xf]
  %v798 = vld [vmem:[%s1 + $0xae8] sm:$0xf]
  %v799 = vld [vmem:[%s1 + $0xaec] sm:$0xf]
  %v800 = vld [vmem:[%s1 + $0xaf0] sm:$0xf]
  %v801 = vld [vmem:[%s1 + $0xaf4] sm:$0xf]
  %v802 = vld [vmem:[%s1 + $0xaf8] sm:$0xf]
  %v803 = vld [vmem:[%s1 + $0xafc] sm:$0xf]
  %v804 = vld [vmem:[%s1 + $0xb00] sm:$0xf]
  %v805 = vld [vmem:[%s1 + $0xb04] sm:$0xf]
  %v806 = vld [vmem:[%s1 + $0xb08] sm:$0xf]
  %v807 = vld [vmem:[%s1 + $0xb0c] sm:$0xf]
  %v808 = vld [vmem:[%s1 + $0xb10] sm:$0xf]
  %v809 = vld [vmem:[%s1 + $0xb14] sm:$0xf]
  %v810 = vld [vmem:[%s1 + $0xb18] sm:$0xf]
  %v811 = vld [vmem:[%s1 + $0xb1c] sm:$0xf]
  %v812 = vld [vmem:[%s1 + $0xb20] sm:$0xf]
  %v813 = vld [vmem:[%s1 + $0xb24] sm:$0xf]
  %v814 = vld [vmem:[%s1 + $0xb28] sm:$0xf]
  %v815 = vld [vmem:[%s1 + $0xb2c] sm:$0xf]
  %v816 = vld [vmem:[%s1 + $0xb30] sm:$0xf]
  %v817 = vld [vmem:[%s1 + $0xb34] sm:$0xf]
  %v818 = vld [vmem:[%s1 + $0xb38] sm:$0xf]
  %v819 = vld [vmem:[%s1 + $0xb3c] sm:$0xf]
  %v820 = vld [vmem:[%s1 + $0xb40] sm:$0xf]
  %v821 = vld [vmem:[%s1 + $0xb44] sm:$0xf]
  %v822 = vld [vmem:[%s1 + $0xb48] sm:$0xf]
  %v823 = vld [vmem:[%s1 + $0xb4c] sm:$0xf]
  %v824 = vld [vmem:[%s1 + $0xb50] sm:$0xf]
  %v825 = vld [vmem:[%s1 + $0xb54] sm:$0xf]
  %v826 = vld [vmem:[%s1 + $0xb58] sm:$0xf]
  %v827 = vld [vmem:[%s1 + $0xb5c] sm:$0xf]
  %v828 = vld [vmem:[%s1 + $0xb60] sm:$0xf]
  %v829 = vld [vmem:[%s1 + $0xb64] sm:$0xf]
  %v830 = vld [vmem:[%s1 + $0xb68] sm:$0xf]
  %v831 = vld [vmem:[%s1 + $0xb6c] sm:$0xf]
  %v832 = vld [vmem:[%s1 + $0xb70] sm:$0xf]
  %v833 = vld [vmem:[%s1 + $0xb74] sm:$0xf]
  %v834 = vld [vmem:[%s1 + $0xb78] sm:$0xf]
  %v835 = vld [vmem:[%s1 + $0xb7c] sm:$0xf]
  %v836 = vld [vmem:[%s1 + $0xb80] sm:$0xf]
  %v837 = vld [vmem:[%s1 + $0xb84] sm:$0xf]
  %v838 = vld [vmem:[%s1 + $0xb88] sm:$0xf]
  %v839 = vld [vmem:[%s1 + $0xb8c] sm:$0xf]
  %v840 = vld [vmem:[%s1 + $0xb90] sm:$0xf]
  %v841 = vld [vmem:[%s1 + $0xb94] sm:$0xf]
  %v842 = vld [vmem:[%s1 + $0xb98] sm:$0xf]
  %v843 = vld [vmem:[%s1 + $0xb9c] sm:$0xf]
  %v844 = vld [vmem:[%s1 + $0xba0] sm:$0xf]
  %v845 = vld [vmem:[%s1 + $0xba4] sm:$0xf]
  %v846 = vld [vmem:[%s1 + $0xba8] sm:$0xf]
  %v847 = vld [vmem:[%s1 + $0xbac] sm:$0xf]
  %v848 = vld [vmem:[%s1 + $0xbb0] sm:$0xf]
  %v849 = vld [vmem:[%s1 + $0xbb4] sm:$0xf]
  %v850 = vld [vmem:[%s1 + $0xbb8] sm:$0xf]
  %v851 = vld [vmem:[%s1 + $0xbbc] sm:$0xf]
  %v852 = vld [vmem:[%s1 + $0xbc0] sm:$0xf]
  %v853 = vld [vmem:[%s1 + $0xbc4] sm:$0xf]
  %v854 = vld [vmem:[%s1 + $0xbc8] sm:$0xf]
  %v855 = vld [vmem:[%s1 + $0xbcc] sm:$0xf]
  %v856 = vld [vmem:[%s1 + $0xbd0] sm:$0xf]
  %v857 = vld [vmem:[%s1 + $0xbd4] sm:$0xf]
  %v858 = vld [vmem:[%s1 + $0xbd8] sm:$0xf]
  %v859 = vld [vmem:[%s1 + $0xbdc] sm:$0xf]
  %v860 = vld [vmem:[%s1 + $0xbe0] sm:$0xf]
  %v861 = vld [vmem:[%s1 + $0xbe4] sm:$0xf]
  %v862 = vld [vmem:[%s1 + $0xbe8] sm:$0xf]
  %v863 = vld [vmem:[%s1 + $0xbec] sm:$0xf]
  %v864 = vld [vmem:[%s1 + $0xbf0] sm:$0xf]
  %v865 = vld [vmem:[%s1 + $0xbf4] sm:$0xf]
  %v866 = vld [vmem:[%s1 + $0xbf8] sm:$0xf]
  %v867 = vld [vmem:[%s1 + $0xbfc] sm:$0xf]
  %v868 = vld [vmem:[%s1 + $0xc00] sm:$0xf]
  %v869 = vld [vmem:[%s1 + $0xc04] sm:$0xf]
  %v870 = vld [vmem:[%s1 + $0xc08] sm:$0xf]
  %v871 = vld [vmem:[%s1 + $0xc0c] sm:$0xf]
  %v872 = vld [vmem:[%s1 + $0xc10] sm:$0xf]
  %v873 = vld [vmem:[%s1 + $0xc14] sm:$0xf]
  %v874 = vld [vmem:[%s1 + $0xc18] sm:$0xf]
  %v875 = vld [vmem:[%s1 + $0xc1c] sm:$0xf]
  %v876 = vld [vmem:[%s1 + $0xc20] sm:$0xf]
  %v877 = vld [vmem:[%s1 + $0xc24] sm:$0xf]
  %v878 = vld [vmem:[%s1 + $0xc28] sm:$0xf]
  %v879 = vld [vmem:[%s1 + $0xc2c] sm:$0xf]
  %v880 = vld [vmem:[%s1 + $0xc30] sm:$0xf]
  %v881 = vld [vmem:[%s1 + $0xc34] sm:$0xf]
  %v882 = vld [vmem:[%s1 + $0xc38] sm:$0xf]
  %v883 = vld [vmem:[%s1 + $0xc3c] sm:$0xf]
  %v884 = vld [vmem:[%s1 + $0xc40] sm:$0xf]
  %v885 = vld [vmem:[%s1 + $0xc44] sm:$0xf]
  %v886 = vld [vmem:[%s1 + $0xc48] sm:$0xf]
  %v887 = vld [vmem:[%s1 + $0xc4c] sm:$0xf]
  %v888 = vld [vmem:[%s1 + $0xc50] sm:$0xf]
  %v889 = vld [vmem:[%s1 + $0xc54] sm:$0xf]
  %v890 = vld [vmem:[%s1 + $0xc58] sm:$0xf]
  %v891 = vld [vmem:[%s1 + $0xc5c] sm:$0xf]
  %v892 = vld [vmem:[%s1 + $0xc60] sm:$0xf]
  %v893 = vld [vmem:[%s1 + $0xc64] sm:$0xf]
  %v894 = vld [vmem:[%s1 + $0xc68] sm:$0xf]
  %v895 = vld [vmem:[%s1 + $0xc6c] sm:$0xf]
  %v896 = vld [vmem:[%s1 + $0xc70] sm:$0xf]
  %v897 = vld [vmem:[%s1 + $0xc74] sm:$0xf]
  %v898 = vld [vmem:[%s1 + $0xc78] sm:$0xf]
  %v899 = vld [vmem:[%s1 + $0xc7c] sm:$0xf]
  %v900 = vld [vmem:[%s1 + $0xc80] sm:$0xf]
  %v901 = vld [vmem:[%s1 + $0xc84] sm:$0xf]
  %v902 = vld [vmem:[%s1 + $0xc88] sm:$0xf]
  %v903 = vld [vmem:[%s1 + $0xc8c] sm:$0xf]
  %v904 = vld [vmem:[%s1 + $0xc90] sm:$0xf]
  %v905 = vld [vmem:[%s1 + $0xc94] sm:$0xf]
  %v906 = vld [vmem:[%s1 + $0xc98] sm:$0xf]
  %v907 = vld [vmem:[%s1 + $0xc9c] sm:$0xf]
  %v908 = vld [vmem:[%s1 + $0xca0] sm:$0xf]
  %v909 = vld [vmem:[%s1 + $0xca4] sm:$0xf]
  %v910 = vld [vmem:[%s1 + $0xca8] sm:$0xf]
  %v911 = vld [vmem:[%s1 + $0xcac] sm:$0xf]
  %v912 = vld [vmem:[%s1 + $0xcb0] sm:$0xf]
  %v913 = vld [vmem:[%s1 + $0xcb4] sm:$0xf]
  %v914 = vld [vmem:[%s1 + $0xcb8] sm:$0xf]
  %v915 = vld [vmem:[%s1 + $0xcbc] sm:$0xf]
  %v916 = vld [vmem:[%s1 + $0xcc0] sm:$0xf]
  %v917 = vld [vmem:[%s1 + $0xcc4] sm:$0xf]
  %v918 = vld [vmem:[%s1 + $0xcc8] sm:$0xf]
  %v919 = vld [vmem:[%s1 + $0xccc] sm:$0xf]
  %v920 = vld [vmem:[%s1 + $0xcd0] sm:$0xf]
  %v921 = vld [vmem:[%s1 + $0xcd4] sm:$0xf]
  %v922 = vld [vmem:[%s1 + $0xcd8] sm:$0xf]
  %v923 = vld [vmem:[%s1 + $0xcdc] sm:$0xf]
  %v924 = vld [vmem:[%s1 + $0xce0] sm:$0xf]
  %v925 = vld [vmem:[%s1 + $0xce4] sm:$0xf]
  %v926 = vld [vmem:[%s1 + $0xce8] sm:$0xf]
  %v927 = vld [vmem:[%s1 + $0xcec] sm:$0xf]
  %v928 = vld [vmem:[%s1 + $0xcf0] sm:$0xf]
  %v929 = vld [vmem:[%s1 + $0xcf4] sm:$0xf]
  %v930 = vld [vmem:[%s1 + $0xcf8] sm:$0xf]
  %v931 = vld [vmem:[%s1 + $0xcfc] sm:$0xf]
  %v932 = vld [vmem:[%s1 + $0xd00] sm:$0xf]
  %v933 = vld [vmem:[%s1 + $0xd04] sm:$0xf]
  %v934 = vld [vmem:[%s1 + $0xd08] sm:$0xf]
  %v935 = vld [vmem:[%s1 + $0xd0c] sm:$0xf]
  %v936 = vld [vmem:[%s1 + $0xd10] sm:$0xf]
  %v937 = vld [vmem:[%s1 + $0xd14] sm:$0xf]
  %v938 = vld [vmem:[%s1 + $0xd18] sm:$0xf]
  %v939 = vld [vmem:[%s1 + $0xd1c] sm:$0xf]
  %v940 = vld [vmem:[%s1 + $0xd20] sm:$0xf]
  %v941 = vld [vmem:[%s1 + $0xd24] sm:$0xf]
  %v942 = vld [vmem:[%s1 + $0xd28] sm:$0xf]
  %v943 = vld [vmem:[%s1 + $0xd2c] sm:$0xf]
  %v944 = vld [vmem:[%s1 + $0xd30] sm:$0xf]
  %v945 = vld [vmem:[%s1 + $0xd34] sm:$0xf]
  %v946 = vld [vmem:[%s1 + $0xd38] sm:$0xf]
  %v947 = vld [vmem:[%s1 + $0xd3c] sm:$0xf]
  %v948 = vld [vmem:[%s1 + $0xd40] sm:$0xf]
  %v949 = vld [vmem:[%s1 + $0xd44] sm:$0xf]
  %v950 = vld [vmem:[%s1 + $0xd48] sm:$0xf]
  %v951 = vld [vmem:[%s1 + $0xd4c] sm:$0xf]
  %v952 = vld [vmem:[%s1 + $0xd50] sm:$0xf]
  %v953 = vld [vmem:[%s1 + $0xd54] sm:$0xf]
  %v954 = vld [vmem:[%s1 + $0xd58] sm:$0xf]
  %v955 = vld [vmem:[%s1 + $0xd5c] sm:$0xf]
  %v956 = vld [vmem:[%s1 + $0xd60] sm:$0xf]
  %v957 = vld [vmem:[%s1 + $0xd64] sm:$0xf]
  %v958 = vld [vmem:[%s1 + $0xd68] sm:$0xf]
  %v959 = vld [vmem:[%s1 + $0xd6c] sm:$0xf]
  %v960 = vld [vmem:[%s1 + $0xd70] sm:$0xf]
  %v961 = vld [vmem:[%s1 + $0xd74] sm:$0xf]
  %v962 = vld [vmem:[%s1 + $0xd78] sm:$0xf]
  %v963 = vld [vmem:[%s1 + $0xd7c] sm:$0xf]
  %v964 = vld [vmem:[%s1 + $0xd80] sm:$0xf]
  %v965 = vld [vmem:[%s1 + $0xd84] sm:$0xf]
  %v966 = vld [vmem:[%s1 + $0xd88] sm:$0xf]
  %v967 = vld [vmem:[%s1 + $0xd8c] sm:$0xf]
  %v968 = vld [vmem:[%s1 + $0xd90] sm:$0xf]
  %v969 = vld [vmem:[%s1 + $0xd94] sm:$0xf]
  %v970 = vld [vmem:[%s1 + $0xd98] sm:$0xf]
  %v971 = vld [vmem:[%s1 + $0xd9c] sm:$0xf]
  %v972 = vld [vmem:[%s1 + $0xda0] sm:$0xf]
  %v973 = vld [vmem:[%s1 + $0xda4] sm:$0xf]
  %v974 = vld [vmem:[%s1 + $0xda8] sm:$0xf]
  %v975 = vld [vmem:[%s1 + $0xdac] sm:$0xf]
  %v976 = vld [vmem:[%s1 + $0xdb0] sm:$0xf]
  %v977 = vld [vmem:[%s1 + $0xdb4] sm:$0xf]
  %v978 = vld [vmem:[%s1 + $0xdb8] sm:$0xf]
  %v979 = vld [vmem:[%s1 + $0xdbc] sm:$0xf]
  %v980 = vld [vmem:[%s1 + $0xdc0] sm:$0xf]
  %v981 = vld [vmem:[%s1 + $0xdc4] sm:$0xf]
  %v982 = vld [vmem:[%s1 + $0xdc8] sm:$0xf]
  %v983 = vld [vmem:[%s1 + $0xdcc] sm:$0xf]
  %v984 = vld [vmem:[%s1 + $0xdd0] sm:$0xf]
  %v985 = vld [vmem:[%s1 + $0xdd4] sm:$0xf]
  %v986 = vld [vmem:[%s1 + $0xdd8] sm:$0xf]
  %v987 = vld [vmem:[%s1 + $0xddc] sm:$0xf]
  %v988 = vld [vmem:[%s1 + $0xde0] sm:$0xf]
  %v989 = vld [vmem:[%s1 + $0xde4] sm:$0xf]
  %v990 = vld [vmem:[%s1 + $0xde8] sm:$0xf]
  %v991 = vld [vmem:[%s1 + $0xdec] sm:$0xf]
  %v992 = vld [vmem:[%s1 + $0xdf0] sm:$0xf]
  %v993 = vld [vmem:[%s1 + $0xdf4] sm:$0xf]
  %v994 = vld [vmem:[%s1 + $0xdf8] sm:$0xf]
  %v995 = vld [vmem:[%s1 + $0xdfc] sm:$0xf]
  %v996 = vld [vmem:[%s1 + $0xe00] sm:$0xf]
  %v997 = vld [vmem:[%s1 + $0xe04] sm:$0xf]
  %v998 = vld [vmem:[%s1 + $0xe08] sm:$0xf]
  %v999 = vld [vmem:[%s1 + $0xe0c] sm:$0xf]
  %v1000 = vld [vmem:[%s1 + $0xe10] sm:$0xf]
  %v1001 = vld [vmem:[%s1 + $0xe14] sm:$0xf]
  %v1002 = vld [vmem:[%s1 + $0xe18] sm:$0xf]
  %v1003 = vld [vmem:[%s1 + $0xe1c] sm:$0xf]
  %v1004 = vld [vmem:[%s1 + $0xe20] sm:$0xf]
  %v1005 = vld [vmem:[%s1 + $0xe24] sm:$0xf]
  %v1006 = vld [vmem:[%s1 + $0xe28] sm:$0xf]
  %v1007 = vld [vmem:[%s1 + $0xe2c] sm:$0xf]
  %v1008 = vld [vmem:[%s1 + $0xe30] sm:$0xf]
  %v1009 = vld [vmem:[%s1 + $0xe34] sm:$0xf]
  %v1010 = vld [vmem:[%s1 + $0xe38] sm:$0xf]
  %v1011 = vld [vmem:[%s1 + $0xe3c] sm:$0xf]
  %v1012 = vld [vmem:[%s1 + $0xe40] sm:$0xf]
  %v1013 = vld [vmem:[%s1 + $0xe44] sm:$0xf]
  %v1014 = vld [vmem:[%s1 + $0xe48] sm:$0xf]
  %v1015 = vld [vmem:[%s1 + $0xe4c] sm:$0xf]
  %v1016 = vld [vmem:[%s1 + $0xe50] sm:$0xf]
  %v1017 = vld [vmem:[%s1 + $0xe54] sm:$0xf]
  %v1018 = vld [vmem:[%s1 + $0xe58] sm:$0xf]
  %v1019 = vld [vmem:[%s1 + $0xe5c] sm:$0xf]
  %v1020 = vld [vmem:[%s1 + $0xe60] sm:$0xf]
  %v1021 = vld [vmem:[%s1 + $0xe64] sm:$0xf]
  %v1022 = vld [vmem:[%s1 + $0xe68] sm:$0xf]
  %v1023 = vld [vmem:[%s1 + $0xe6c] sm:$0xf]
  %v1024 = vld [vmem:[%s1 + $0xe70] sm:$0xf]
  %v1025 = vld [vmem:[%s1 + $0xe74] sm:$0xf]
  %v1026 = vld [vmem:[%s1 + $0xe78] sm:$0xf]
  %v1027 = vld [vmem:[%s1 + $0xe7c] sm:$0xf]
  %v1028 = vld [vmem:[%s1 + $0xe80] sm:$0xf]
  %v1029 = vld [vmem:[%s1 + $0xe84] sm:$0xf]
  %v1030 = vld [vmem:[%s1 + $0xe88] sm:$0xf]
  %v1031 = vld [vmem:[%s1 + $0xe8c] sm:$0xf]
  %v1032 = vld [vmem:[%s1 + $0xe90] sm:$0xf]
  %v1033 = vld [vmem:[%s1 + $0xe94] sm:$0xf]
  %v1034 = vld [vmem:[%s1 + $0xe98] sm:$0xf]
  %v1035 = vld [vmem:[%s1 + $0xe9c] sm:$0xf]
  %v1036 = vld [vmem:[%s1 + $0xea0] sm:$0xf]
  %v1037 = vld [vmem:[%s1 + $0xea4] sm:$0xf]
  %v1038 = vld [vmem:[%s1 + $0xea8] sm:$0xf]
  %v1039 = vld [vmem:[%s1 + $0xeac] sm:$0xf]
  %v1040 = vld [vmem:[%s1 + $0xeb0] sm:$0xf]
  %v1041 = vld [vmem:[%s1 + $0xeb4] sm:$0xf]
  %v1042 = vld [vmem:[%s1 + $0xeb8] sm:$0xf]
  %v1043 = vld [vmem:[%s1 + $0xebc] sm:$0xf]
  %v1044 = vld [vmem:[%s1 + $0xec0] sm:$0xf]
  %v1045 = vld [vmem:[%s1 + $0xec4] sm:$0xf]
  %v1046 = vld [vmem:[%s1 + $0xec8] sm:$0xf]
  %v1047 = vld [vmem:[%s1 + $0xecc] sm:$0xf]
  %v1048 = vld [vmem:[%s1 + $0xed0] sm:$0xf]
  %v1049 = vld [vmem:[%s1 + $0xed4] sm:$0xf]
  %v1050 = vld [vmem:[%s1 + $0xed8] sm:$0xf]
  %v1051 = vld [vmem:[%s1 + $0xedc] sm:$0xf]
  %v1052 = vld [vmem:[%s1 + $0xee0] sm:$0xf]
  %v1053 = vld [vmem:[%s1 + $0xee4] sm:$0xf]
  %v1054 = vld [vmem:[%s1 + $0xee8] sm:$0xf]
  %v1055 = vld [vmem:[%s1 + $0xeec] sm:$0xf]
  %v1056 = vld [vmem:[%s1 + $0xef0] sm:$0xf]
  %v1057 = vld [vmem:[%s1 + $0xef4] sm:$0xf]
  %v1058 = vld [vmem:[%s1 + $0xef8] sm:$0xf]
  %v1059 = vld [vmem:[%s1 + $0xefc] sm:$0xf]
  %v1060 = vld [vmem:[%s1 + $0xf00] sm:$0xf]
  %v1061 = vld [vmem:[%s1 + $0xf04] sm:$0xf]
  %v1062 = vld [vmem:[%s1 + $0xf08] sm:$0xf]
  %v1063 = vld [vmem:[%s1 + $0xf0c] sm:$0xf]
  %v1064 = vld [vmem:[%s1 + $0xf10] sm:$0xf]
  %v1065 = vld [vmem:[%s1 + $0xf14] sm:$0xf]
  %v1066 = vld [vmem:[%s1 + $0xf18] sm:$0xf]
  %v1067 = vld [vmem:[%s1 + $0xf1c] sm:$0xf]
  %v1068 = vld [vmem:[%s1 + $0xf20] sm:$0xf]
  %v1069 = vld [vmem:[%s1 + $0xf24] sm:$0xf]
  %v1070 = vld [vmem:[%s1 + $0xf28] sm:$0xf]
  %v1071 = vld [vmem:[%s1 + $0xf2c] sm:$0xf]
  %v1072 = vld [vmem:[%s1 + $0xf30] sm:$0xf]
  %v1073 = vld [vmem:[%s1 + $0xf34] sm:$0xf]
  %v1074 = vld [vmem:[%s1 + $0xf38] sm:$0xf]
  %v1075 = vld [vmem:[%s1 + $0xf3c] sm:$0xf]
  %v1076 = vld [vmem:[%s1 + $0xf40] sm:$0xf]
  %v1077 = vld [vmem:[%s1 + $0xf44] sm:$0xf]
  %v1078 = vld [vmem:[%s1 + $0xf48] sm:$0xf]
  %v1079 = vld [vmem:[%s1 + $0xf4c] sm:$0xf]
  %v1080 = vld [vmem:[%s1 + $0xf50] sm:$0xf]
  %v1081 = vld [vmem:[%s1 + $0xf54] sm:$0xf]
  %v1082 = vld [vmem:[%s1 + $0xf58] sm:$0xf]
  %v1083 = vld [vmem:[%s1 + $0xf5c] sm:$0xf]
  %v1084 = vld [vmem:[%s1 + $0xf60] sm:$0xf]
  %v1085 = vld [vmem:[%s1 + $0xf64] sm:$0xf]
  %v1086 = vld [vmem:[%s1 + $0xf68] sm:$0xf]
  %v1087 = vld [vmem:[%s1 + $0xf6c] sm:$0xf]
  %v1088 = vld [vmem:[%s1 + $0xf70] sm:$0xf]
  %v1089 = vld [vmem:[%s1 + $0xf74] sm:$0xf]
  %v1090 = vld [vmem:[%s1 + $0xf78] sm:$0xf]
  %v1091 = vld [vmem:[%s1 + $0xf7c] sm:$0xf]
  %v1092 = vld [vmem:[%s1 + $0xf80] sm:$0xf]
  %v1093 = vld [vmem:[%s1 + $0xf84] sm:$0xf]
  %v1094 = vld [vmem:[%s1 + $0xf88] sm:$0xf]
  %v1095 = vld [vmem:[%s1 + $0xf8c] sm:$0xf]
  %v1096 = vld [vmem:[%s1 + $0xf90] sm:$0xf]
  %v1097 = vld [vmem:[%s1 + $0xf94] sm:$0xf]
  %v1098 = vld [vmem:[%s1 + $0xf98] sm:$0xf]
  %v1099 = vld [vmem:[%s1 + $0xf9c] sm:$0xf]
  %v1100 = vld [vmem:[%s1 + $0xfa0] sm:$0xf]
  %v1101 = vld [vmem:[%s1 + $0xfa4] sm:$0xf]
  %v1102 = vld [vmem:[%s1 + $0xfa8] sm:$0xf]
  %v1103 = vld [vmem:[%s1 + $0xfac] sm:$0xf]
  %v1104 = vld [vmem:[%s1 + $0xfb0] sm:$0xf]
  %v1105 = vld [vmem:[%s1 + $0xfb4] sm:$0xf]
  %v1106 = vld [vmem:[%s1 + $0xfb8] sm:$0xf]
  %v1107 = vld [vmem:[%s1 + $0xfbc] sm:$0xf]
  %v1108 = vld [vmem:[%s1 + $0xfc0] sm:$0xf]
  %v1109 = vld [vmem:[%s1 + $0xfc4] sm:$0xf]
  %v1110 = vld [vmem:[%s1 + $0xfc8] sm:$0xf]
  %v1111 = vld [vmem:[%s1 + $0xfcc] sm:$0xf]
  %v1112 = vld [vmem:[%s1 + $0xfd0] sm:$0xf]
  %v1113 = vld [vmem:[%s1 + $0xfd4] sm:$0xf]
  %v1114 = vld [vmem:[%s1 + $0xfd8] sm:$0xf]
  %v1115 = vld [vmem:[%s1 + $0xfdc] sm:$0xf]
  %v1116 = vld [vmem:[%s1 + $0xfe0] sm:$0xf]
  %v1117 = vld [vmem:[%s1 + $0xfe4] sm:$0xf]
  %v1118 = vld [vmem:[%s1 + $0xfe8] sm:$0xf]
  %v1119 = vld [vmem:[%s1 + $0xfec] sm:$0xf]
  %v1120 = vld [vmem:[%s1 + $0xff0] sm:$0xf]
  %v1121 = vld [vmem:[%s1 + $0xff4] sm:$0xf]
  %v1122 = vld [vmem:[%s1 + $0xff8] sm:$0xf]
  %v1123 = vld [vmem:[%s1 + $0xffc] sm:$0xf]
  %v1124 = vld [vmem:[%s1 + $0x1000] sm:$0xf]
  %v1125 = vld [vmem:[%s1 + $0x1004] sm:$0xf]
  %v1126 = vld [vmem:[%s1 + $0x1008] sm:$0xf]
  %v1127 = vld [vmem:[%s1 + $0x100c] sm:$0xf]
  %v1128 = vld [vmem:[%s1 + $0x1010] sm:$0xf]
  %v1129 = vld [vmem:[%s1 + $0x1014] sm:$0xf]
  %v1130 = vld [vmem:[%s1 + $0x1018] sm:$0xf]
  %v1131 = vld [vmem:[%s1 + $0x101c] sm:$0xf]
  %v1132 = vld [vmem:[%s1 + $0x1020] sm:$0xf]
  %v1133 = vld [vmem:[%s1 + $0x1024] sm:$0xf]
  %v1134 = vld [vmem:[%s1 + $0x1028] sm:$0xf]
  %v1135 = vld [vmem:[%s1 + $0x102c] sm:$0xf]
  %v1136 = vld [vmem:[%s1 + $0x1030] sm:$0xf]
  %v1137 = vld [vmem:[%s1 + $0x1034] sm:$0xf]
  %v1138 = vld [vmem:[%s1 + $0x1038] sm:$0xf]
  %v1139 = vld [vmem:[%s1 + $0x103c] sm:$0xf]
  %v1140 = vld [vmem:[%s1 + $0x1040] sm:$0xf]
  %v1141 = vld [vmem:[%s1 + $0x1044] sm:$0xf]
  %v1142 = vld [vmem:[%s1 + $0x1048] sm:$0xf]
  %v1143 = vld [vmem:[%s1 + $0x104c] sm:$0xf]
  %v1144 = vld [vmem:[%s1 + $0x1050] sm:$0xf]
  %v1145 = vld [vmem:[%s1 + $0x1054] sm:$0xf]
  %v1146 = vld [vmem:[%s1 + $0x1058] sm:$0xf]
  %v1147 = vld [vmem:[%s1 + $0x105c] sm:$0xf]
  %v1148 = vld [vmem:[%s1 + $0x1060] sm:$0xf]
  %v1149 = vld [vmem:[%s1 + $0x1064] sm:$0xf]
  %v1150 = vld [vmem:[%s1 + $0x1068] sm:$0xf]
  %v1151 = vld [vmem:[%s1 + $0x106c] sm:$0xf]
  %v1152 = vld [vmem:[%s1 + $0x1070] sm:$0xf]
  %v1153 = vld [vmem:[%s1 + $0x1074] sm:$0xf]
  %v1154 = vld [vmem:[%s1 + $0x1078] sm:$0xf]
  %v1155 = vld [vmem:[%s1 + $0x107c] sm:$0xf]
  %v1156 = vld [vmem:[%s1 + $0x1080] sm:$0xf]
  %v1157 = vld [vmem:[%s1 + $0x1084] sm:$0xf]
  %v1158 = vld [vmem:[%s1 + $0x1088] sm:$0xf]
  %v1159 = vld [vmem:[%s1 + $0x108c] sm:$0xf]
  %v1160 = vld [vmem:[%s1 + $0x1090] sm:$0xf]
  %v1161 = vld [vmem:[%s1 + $0x1094] sm:$0xf]
  %v1162 = vld [vmem:[%s1 + $0x1098] sm:$0xf]
  %v1163 = vld [vmem:[%s1 + $0x109c] sm:$0xf]
  %v1164 = vld [vmem:[%s1 + $0x10a0] sm:$0xf]
  %v1165 = vld [vmem:[%s1 + $0x10a4] sm:$0xf]
  %v1166 = vld [vmem:[%s1 + $0x10a8] sm:$0xf]
  %v1167 = vld [vmem:[%s1 + $0x10ac] sm:$0xf]
  %v1168 = vld [vmem:[%s1 + $0x10b0] sm:$0xf]
  %v1169 = vld [vmem:[%s1 + $0x10b4] sm:$0xf]
  %v1170 = vld [vmem:[%s1 + $0x10b8] sm:$0xf]
  %v1171 = vld [vmem:[%s1 + $0x10bc] sm:$0xf]
  %v1172 = vld [vmem:[%s1 + $0x10c0] sm:$0xf]
  %v1173 = vld [vmem:[%s1 + $0x10c4] sm:$0xf]
  %v1174 = vld [vmem:[%s1 + $0x10c8] sm:$0xf]
  %v1175 = vld [vmem:[%s1 + $0x10cc] sm:$0xf]
  %v1176 = vld [vmem:[%s1 + $0x10d0] sm:$0xf]
  %v1177 = vld [vmem:[%s1 + $0x10d4] sm:$0xf]
  %v1178 = vld [vmem:[%s1 + $0x10d8] sm:$0xf]
  %v1179 = vld [vmem:[%s1 + $0x10dc] sm:$0xf]
  %v1180 = vld [vmem:[%s1 + $0x10e0] sm:$0xf]
  %v1181 = vld [vmem:[%s1 + $0x10e4] sm:$0xf]
  %v1182 = vld [vmem:[%s1 + $0x10e8] sm:$0xf]
  %v1183 = vld [vmem:[%s1 + $0x10ec] sm:$0xf]
  %v1184 = vld [vmem:[%s1 + $0x10f0] sm:$0xf]
  %v1185 = vld [vmem:[%s1 + $0x10f4] sm:$0xf]
  %v1186 = vld [vmem:[%s1 + $0x10f8] sm:$0xf]
  %v1187 = vld [vmem:[%s1 + $0x10fc] sm:$0xf]
  %v1188 = vld [vmem:[%s1 + $0x1100] sm:$0xf]
  %v1189 = vld [vmem:[%s1 + $0x1104] sm:$0xf]
  %v1190 = vld [vmem:[%s1 + $0x1108] sm:$0xf]
  %v1191 = vld [vmem:[%s1 + $0x110c] sm:$0xf]
  %v1192 = vld [vmem:[%s1 + $0x1110] sm:$0xf]
  %v1193 = vld [vmem:[%s1 + $0x1114] sm:$0xf]
  %v1194 = vld [vmem:[%s1 + $0x1118] sm:$0xf]
  %v1195 = vld [vmem:[%s1 + $0x111c] sm:$0xf]
  %v1196 = vld [vmem:[%s1 + $0x1120] sm:$0xf]
  %v1197 = vld [vmem:[%s1 + $0x1124] sm:$0xf]
  %v1198 = vld [vmem:[%s1 + $0x1128] sm:$0xf]
  %v1199 = vld [vmem:[%s1 + $0x112c] sm:$0xf]
  %v1200 = vld [vmem:[%s1 + $0x1130] sm:$0xf]
  %v1201 = vld [vmem:[%s1 + $0x1134] sm:$0xf]
  %v1202 = vld [vmem:[%s1 + $0x1138] sm:$0xf]
  %v1203 = vld [vmem:[%s1 + $0x113c] sm:$0xf]
  %v1204 = vld [vmem:[%s1 + $0x1140] sm:$0xf]
  %v1205 = vld [vmem:[%s1 + $0x1144] sm:$0xf]
  %v1206 = vld [vmem:[%s1 + $0x1148] sm:$0xf]
  %v1207 = vld [vmem:[%s1 + $0x114c] sm:$0xf]
  %v1208 = vld [vmem:[%s1 + $0x1150] sm:$0xf]
  %v1209 = vld [vmem:[%s1 + $0x1154] sm:$0xf]
  %v1210 = vld [vmem:[%s1 + $0x1158] sm:$0xf]
  %v1211 = vld [vmem:[%s1 + $0x115c] sm:$0xf]
  %v1212 = vld [vmem:[%s1 + $0x1160] sm:$0xf]
  %v1213 = vld [vmem:[%s1 + $0x1164] sm:$0xf]
  %v1214 = vld [vmem:[%s1 + $0x1168] sm:$0xf]
  %v1215 = vld [vmem:[%s1 + $0x116c] sm:$0xf]
  %v1216 = vld [vmem:[%s1 + $0x1170] sm:$0xf]
  %v1217 = vld [vmem:[%s1 + $0x1174] sm:$0xf]
  %v1218 = vld [vmem:[%s1 + $0x1178] sm:$0xf]
  %v1219 = vld [vmem:[%s1 + $0x117c] sm:$0xf]
  %v1220 = vld [vmem:[%s1 + $0x1180] sm:$0xf]
  %v1221 = vld [vmem:[%s1 + $0x1184] sm:$0xf]
  %v1222 = vld [vmem:[%s1 + $0x1188] sm:$0xf]
  %v1223 = vld [vmem:[%s1 + $0x118c] sm:$0xf]
  %v1224 = vld [vmem:[%s1 + $0x1190] sm:$0xf]
  %v1225 = vld [vmem:[%s1 + $0x1194] sm:$0xf]
  %v1226 = vld [vmem:[%s1 + $0x1198] sm:$0xf]
  %v1227 = vld [vmem:[%s1 + $0x119c] sm:$0xf]
  %v1228 = vld [vmem:[%s1 + $0x11a0] sm:$0xf]
  %v1229 = vld [vmem:[%s1 + $0x11a4] sm:$0xf]
  %v1230 = vld [vmem:[%s1 + $0x11a8] sm:$0xf]
  %v1231 = vld [vmem:[%s1 + $0x11ac] sm:$0xf]
  %v1232 = vld [vmem:[%s1 + $0x11b0] sm:$0xf]
  %v1233 = vld [vmem:[%s1 + $0x11b4] sm:$0xf]
  %v1234 = vld [vmem:[%s1 + $0x11b8] sm:$0xf]
  %v1235 = vld [vmem:[%s1 + $0x11bc] sm:$0xf]
  %v1236 = vld [vmem:[%s1 + $0x11c0] sm:$0xf]
  %v1237 = vld [vmem:[%s1 + $0x11c4] sm:$0xf]
  %v1238 = vld [vmem:[%s1 + $0x11c8] sm:$0xf]
  %v1239 = vld [vmem:[%s1 + $0x11cc] sm:$0xf]
  %v1240 = vld [vmem:[%s1 + $0x11d0] sm:$0xf]
  %v1241 = vld [vmem:[%s1 + $0x11d4] sm:$0xf]
  %v1242 = vld [vmem:[%s1 + $0x11d8] sm:$0xf]
  %v1243 = vld [vmem:[%s1 + $0x11dc] sm:$0xf]
  %v1244 = vld [vmem:[%s1 + $0x11e0] sm:$0xf]
  %v1245 = vld [vmem:[%s1 + $0x11e4] sm:$0xf]
  %v1246 = vld [vmem:[%s1 + $0x11e8] sm:$0xf]
  %v1247 = vld [vmem:[%s1 + $0x11ec] sm:$0xf]
  %v1248 = vld [vmem:[%s1 + $0x11f0] sm:$0xf]
  %v1249 = vld [vmem:[%s1 + $0x11f4] sm:$0xf]
  %v1250 = vld [vmem:[%s1 + $0x11f8] sm:$0xf]
  %v1251 = vld [vmem:[%s1 + $0x11fc] sm:$0xf]
  %v1252 = vld [vmem:[%s1 + $0x1200] sm:$0xf]
  %v1253 = vld [vmem:[%s1 + $0x1204] sm:$0xf]
  %v1254 = vld [vmem:[%s1 + $0x1208] sm:$0xf]
  %v1255 = vld [vmem:[%s1 + $0x120c] sm:$0xf]
  %v1256 = vld [vmem:[%s1 + $0x1210] sm:$0xf]
  %v1257 = vld [vmem:[%s1 + $0x1214] sm:$0xf]
  %v1258 = vld [vmem:[%s1 + $0x1218] sm:$0xf]
  %v1259 = vld [vmem:[%s1 + $0x121c] sm:$0xf]
  %v1260 = vld [vmem:[%s1 + $0x1220] sm:$0xf]
  %v1261 = vld [vmem:[%s1 + $0x1224] sm:$0xf]
  %v1262 = vld [vmem:[%s1 + $0x1228] sm:$0xf]
  %v1263 = vld [vmem:[%s1 + $0x122c] sm:$0xf]
  %v1264 = vld [vmem:[%s1 + $0x1230] sm:$0xf]
  %v1265 = vld [vmem:[%s1 + $0x1234] sm:$0xf]
  %v1266 = vld [vmem:[%s1 + $0x1238] sm:$0xf]
  %v1267 = vld [vmem:[%s1 + $0x123c] sm:$0xf]
  %v1268 = vld [vmem:[%s1 + $0x1240] sm:$0xf]
  %v1269 = vld [vmem:[%s1 + $0x1244] sm:$0xf]
  %v1270 = vld [vmem:[%s1 + $0x1248] sm:$0xf]
  %v1271 = vld [vmem:[%s1 + $0x124c] sm:$0xf]
  %v1272 = vld [vmem:[%s1 + $0x1250] sm:$0xf]
  %v1273 = vld [vmem:[%s1 + $0x1254] sm:$0xf]
  %v1274 = vld [vmem:[%s1 + $0x1258] sm:$0xf]
  %v1275 = vld [vmem:[%s1 + $0x125c] sm:$0xf]
  %v1276 = vld [vmem:[%s1 + $0x1260] sm:$0xf]
  %v1277 = vld [vmem:[%s1 + $0x1264] sm:$0xf]
  %v1278 = vld [vmem:[%s1 + $0x1268] sm:$0xf]
  %v1279 = vld [vmem:[%s1 + $0x126c] sm:$0xf]
  %v1280 = vld [vmem:[%s1 + $0x1270] sm:$0xf]
  %v1281 = vld [vmem:[%s1 + $0x1274] sm:$0xf]
  %v1282 = vld [vmem:[%s1 + $0x1278] sm:$0xf]
  %v1283 = vld [vmem:[%s1 + $0x127c] sm:$0xf]
  %v1284 = vld [vmem:[%s1 + $0x1280] sm:$0xf]
  %v1285 = vld [vmem:[%s1 + $0x1284] sm:$0xf]
  %v1286 = vld [vmem:[%s1 + $0x1288] sm:$0xf]
  %v1287 = vld [vmem:[%s1 + $0x128c] sm:$0xf]
  %v1288 = vld [vmem:[%s1 + $0x1290] sm:$0xf]
  %v1289 = vld [vmem:[%s1 + $0x1294] sm:$0xf]
  %v1290 = vld [vmem:[%s1 + $0x1298] sm:$0xf]
  %v1291 = vld [vmem:[%s1 + $0x129c] sm:$0xf]
  %v1292 = vld [vmem:[%s1 + $0x12a0] sm:$0xf]
  %v1293 = vld [vmem:[%s1 + $0x12a4] sm:$0xf]
  %v1294 = vld [vmem:[%s1 + $0x12a8] sm:$0xf]
  %v1295 = vld [vmem:[%s1 + $0x12ac] sm:$0xf]
  %v1296 = vld [vmem:[%s1 + $0x12b0] sm:$0xf]
  %v1297 = vld [vmem:[%s1 + $0x12b4] sm:$0xf]
  %v1298 = vld [vmem:[%s1 + $0x12b8] sm:$0xf]
  %v1299 = vld [vmem:[%s1 + $0x12bc] sm:$0xf]
  %v1300 = vld [vmem:[%s1 + $0x12c0] sm:$0xf]
  %v1301 = vld [vmem:[%s1 + $0x12c4] sm:$0xf]
  %v1302 = vld [vmem:[%s1 + $0x12c8] sm:$0xf]
  %v1303 = vld [vmem:[%s1 + $0x12cc] sm:$0xf]
  %v1304 = vld [vmem:[%s1 + $0x12d0] sm:$0xf]
  %v1305 = vld [vmem:[%s1 + $0x12d4] sm:$0xf]
  %v1306 = vld [vmem:[%s1 + $0x12d8] sm:$0xf]
  %v1307 = vld [vmem:[%s1 + $0x12dc] sm:$0xf]
  %v1308 = vld [vmem:[%s1 + $0x12e0] sm:$0xf]
  %v1309 = vld [vmem:[%s1 + $0x12e4] sm:$0xf]
  %v1310 = vld [vmem:[%s1 + $0x12e8] sm:$0xf]
  %v1311 = vld [vmem:[%s1 + $0x12ec] sm:$0xf]
  %v1312 = vld [vmem:[%s1 + $0x12f0] sm:$0xf]
  %v1313 = vld [vmem:[%s1 + $0x12f4] sm:$0xf]
  %v1314 = vld [vmem:[%s1 + $0x12f8] sm:$0xf]
  %v1315 = vld [vmem:[%s1 + $0x12fc] sm:$0xf]
  %v1316 = vld [vmem:[%s1 + $0x1300] sm:$0xf]
  %v1317 = vld [vmem:[%s1 + $0x1304] sm:$0xf]
  %v1318 = vld [vmem:[%s1 + $0x1308] sm:$0xf]
  %v1319 = vld [vmem:[%s1 + $0x130c] sm:$0xf]
  %v1320 = vld [vmem:[%s1 + $0x1310] sm:$0xf]
  %v1321 = vld [vmem:[%s1 + $0x1314] sm:$0xf]
  %v1322 = vld [vmem:[%s1 + $0x1318] sm:$0xf]
  %v1323 = vld [vmem:[%s1 + $0x131c] sm:$0xf]
  %v1324 = vld [vmem:[%s1 + $0x1320] sm:$0xf]
  %v1325 = vld [vmem:[%s1 + $0x1324] sm:$0xf]
  %v1326 = vld [vmem:[%s1 + $0x1328] sm:$0xf]
  %v1327 = vld [vmem:[%s1 + $0x132c] sm:$0xf]
  %v1328 = vld [vmem:[%s1 + $0x1330] sm:$0xf]
  %v1329 = vld [vmem:[%s1 + $0x1334] sm:$0xf]
  %v1330 = vld [vmem:[%s1 + $0x1338] sm:$0xf]
  %v1331 = vld [vmem:[%s1 + $0x133c] sm:$0xf]
  %v1332 = vld [vmem:[%s1 + $0x1340] sm:$0xf]
  %v1333 = vld [vmem:[%s1 + $0x1344] sm:$0xf]
  %v1334 = vld [vmem:[%s1 + $0x1348] sm:$0xf]
  %v1335 = vld [vmem:[%s1 + $0x134c] sm:$0xf]
  %v1336 = vld [vmem:[%s1 + $0x1350] sm:$0xf]
  %v1337 = vld [vmem:[%s1 + $0x1354] sm:$0xf]
  %v1338 = vld [vmem:[%s1 + $0x1358] sm:$0xf]
  %v1339 = vld [vmem:[%s1 + $0x135c] sm:$0xf]
  %v1340 = vld [vmem:[%s1 + $0x1360] sm:$0xf]
  %v1341 = vld [vmem:[%s1 + $0x1364] sm:$0xf]
  %v1342 = vld [vmem:[%s1 + $0x1368] sm:$0xf]
  %v1343 = vld [vmem:[%s1 + $0x136c] sm:$0xf]
  %v1344 = vld [vmem:[%s1 + $0x1370] sm:$0xf]
  %v1345 = vld [vmem:[%s1 + $0x1374] sm:$0xf]
  %v1346 = vld [vmem:[%s1 + $0x1378] sm:$0xf]
  %v1347 = vld [vmem:[%s1 + $0x137c] sm:$0xf]
  %v1348 = vld [vmem:[%s1 + $0x1380] sm:$0xf]
  %v1349 = vld [vmem:[%s1 + $0x1384] sm:$0xf]
  %v1350 = vld [vmem:[%s1 + $0x1388] sm:$0xf]
  %v1351 = vld [vmem:[%s1 + $0x138c] sm:$0xf]
  %v1352 = vld [vmem:[%s1 + $0x1390] sm:$0xf]
  %v1353 = vld [vmem:[%s1 + $0x1394] sm:$0xf]
  %v1354 = vld [vmem:[%s1 + $0x1398] sm:$0xf]
  %v1355 = vld [vmem:[%s1 + $0x139c] sm:$0xf]
  %v1356 = vld [vmem:[%s1 + $0x13a0] sm:$0xf]
  %v1357 = vld [vmem:[%s1 + $0x13a4] sm:$0xf]
  %v1358 = vld [vmem:[%s1 + $0x13a8] sm:$0xf]
  %v1359 = vld [vmem:[%s1 + $0x13ac] sm:$0xf]
  %v1360 = vld [vmem:[%s1 + $0x13b0] sm:$0xf]
  %v1361 = vld [vmem:[%s1 + $0x13b4] sm:$0xf]
  %v1362 = vld [vmem:[%s1 + $0x13b8] sm:$0xf]
  %v1363 = vld [vmem:[%s1 + $0x13bc] sm:$0xf]
  %v1364 = vld [vmem:[%s1 + $0x13c0] sm:$0xf]
  %v1365 = vld [vmem:[%s1 + $0x13c4] sm:$0xf]
  %v1366 = vld [vmem:[%s1 + $0x13c8] sm:$0xf]
  %v1367 = vld [vmem:[%s1 + $0x13cc] sm:$0xf]
  %v1368 = vld [vmem:[%s1 + $0x13d0] sm:$0xf]
  %v1369 = vld [vmem:[%s1 + $0x13d4] sm:$0xf]
  %v1370 = vld [vmem:[%s1 + $0x13d8] sm:$0xf]
  %v1371 = vld [vmem:[%s1 + $0x13dc] sm:$0xf]
  %v1372 = vld [vmem:[%s1 + $0x13e0] sm:$0xf]
  %v1373 = vld [vmem:[%s1 + $0x13e4] sm:$0xf]
  %v1374 = vld [vmem:[%s1 + $0x13e8] sm:$0xf]
  %v1375 = vld [vmem:[%s1 + $0x13ec] sm:$0xf]
  %v1376 = vld [vmem:[%s1 + $0x13f0] sm:$0xf]
  %v1377 = vld [vmem:[%s1 + $0x13f4] sm:$0xf]
  %v1378 = vld [vmem:[%s1 + $0x13f8] sm:$0xf]
  %v1379 = vld [vmem:[%s1 + $0x13fc] sm:$0xf]
  %v1380 = vld [vmem:[%s1 + $0x1400] sm:$0xf]
  %v1381 = vld [vmem:[%s1 + $0x1404] sm:$0xf]
  %v1382 = vld [vmem:[%s1 + $0x1408] sm:$0xf]
  %v1383 = vld [vmem:[%s1 + $0x140c] sm:$0xf]
  %v1384 = vld [vmem:[%s1 + $0x1410] sm:$0xf]
  %v1385 = vld [vmem:[%s1 + $0x1414] sm:$0xf]
  %v1386 = vld [vmem:[%s1 + $0x1418] sm:$0xf]
  %v1387 = vld [vmem:[%s1 + $0x141c] sm:$0xf]
  %v1388 = vld [vmem:[%s1 + $0x1420] sm:$0xf]
  %v1389 = vld [vmem:[%s1 + $0x1424] sm:$0xf]
  %v1390 = vld [vmem:[%s1 + $0x1428] sm:$0xf]
  %v1391 = vld [vmem:[%s1 + $0x142c] sm:$0xf]
  %v1392 = vld [vmem:[%s1 + $0x1430] sm:$0xf]
  %v1393 = vld [vmem:[%s1 + $0x1434] sm:$0xf]
  %v1394 = vld [vmem:[%s1 + $0x1438] sm:$0xf]
  %v1395 = vld [vmem:[%s1 + $0x143c] sm:$0xf]
  %v1396 = vld [vmem:[%s1 + $0x1440] sm:$0xf]
  %v1397 = vld [vmem:[%s1 + $0x1444] sm:$0xf]
  %v1398 = vld [vmem:[%s1 + $0x1448] sm:$0xf]
  %v1399 = vld [vmem:[%s1 + $0x144c] sm:$0xf]
  %v1400 = vld [vmem:[%s1 + $0x1450] sm:$0xf]
  %v1401 = vld [vmem:[%s1 + $0x1454] sm:$0xf]
  %v1402 = vld [vmem:[%s1 + $0x1458] sm:$0xf]
  %v1403 = vld [vmem:[%s1 + $0x145c] sm:$0xf]
  %v1404 = vld [vmem:[%s1 + $0x1460] sm:$0xf]
  %v1405 = vld [vmem:[%s1 + $0x1464] sm:$0xf]
  %v1406 = vld [vmem:[%s1 + $0x1468] sm:$0xf]
  %v1407 = vld [vmem:[%s1 + $0x146c] sm:$0xf]
  %v1408 = vld [vmem:[%s1 + $0x1470] sm:$0xf]
  %v1409 = vld [vmem:[%s1 + $0x1474] sm:$0xf]
  %v1410 = vld [vmem:[%s1 + $0x1478] sm:$0xf]
  %v1411 = vld [vmem:[%s1 + $0x147c] sm:$0xf]
  %v1412 = vld [vmem:[%s1 + $0x1480] sm:$0xf]
  %v1413 = vld [vmem:[%s1 + $0x1484] sm:$0xf]
  %v1414 = vld [vmem:[%s1 + $0x1488] sm:$0xf]
  %v1415 = vld [vmem:[%s1 + $0x148c] sm:$0xf]
  %v1416 = vld [vmem:[%s1 + $0x1490] sm:$0xf]
  %v1417 = vld [vmem:[%s1 + $0x1494] sm:$0xf]
  %v1418 = vld [vmem:[%s1 + $0x1498] sm:$0xf]
  %v1419 = vld [vmem:[%s1 + $0x149c] sm:$0xf]
  %v1420 = vld [vmem:[%s1 + $0x14a0] sm:$0xf]
  %v1421 = vld [vmem:[%s1 + $0x14a4] sm:$0xf]
  %v1422 = vld [vmem:[%s1 + $0x14a8] sm:$0xf]
  %v1423 = vld [vmem:[%s1 + $0x14ac] sm:$0xf]
  %v1424 = vld [vmem:[%s1 + $0x14b0] sm:$0xf]
  %v1425 = vld [vmem:[%s1 + $0x14b4] sm:$0xf]
  %v1426 = vld [vmem:[%s1 + $0x14b8] sm:$0xf]
  %v1427 = vld [vmem:[%s1 + $0x14bc] sm:$0xf]
  %v1428 = vld [vmem:[%s1 + $0x14c0] sm:$0xf]
  %v1429 = vld [vmem:[%s1 + $0x14c4] sm:$0xf]
  %v1430 = vld [vmem:[%s1 + $0x14c8] sm:$0xf]
  %v1431 = vld [vmem:[%s1 + $0x14cc] sm:$0xf]
  %v1432 = vld [vmem:[%s1 + $0x14d0] sm:$0xf]
  %v1433 = vld [vmem:[%s1 + $0x14d4] sm:$0xf]
  %v1434 = vld [vmem:[%s1 + $0x14d8] sm:$0xf]
  %v1435 = vld [vmem:[%s1 + $0x14dc] sm:$0xf]
  %v1436 = vld [vmem:[%s1 + $0x14e0] sm:$0xf]
  %v1437 = vld [vmem:[%s1 + $0x14e4] sm:$0xf]
  %v1438 = vld [vmem:[%s1 + $0x14e8] sm:$0xf]
  %v1439 = vld [vmem:[%s1 + $0x14ec] sm:$0xf]
  %v1440 = vld [vmem:[%s1 + $0x14f0] sm:$0xf]
  %v1441 = vld [vmem:[%s1 + $0x14f4] sm:$0xf]
  %v1442 = vld [vmem:[%s1 + $0x14f8] sm:$0xf]
  %v1443 = vld [vmem:[%s1 + $0x14fc] sm:$0xf]
  %v1444 = vld [vmem:[%s1 + $0x1500] sm:$0xf]
  %v1445 = vld [vmem:[%s1 + $0x1504] sm:$0xf]
  %v1446 = vld [vmem:[%s1 + $0x1508] sm:$0xf]
  %v1447 = vld [vmem:[%s1 + $0x150c] sm:$0xf]
  %v1448 = vld [vmem:[%s1 + $0x1510] sm:$0xf]
  %v1449 = vld [vmem:[%s1 + $0x1514] sm:$0xf]
  %v1450 = vld [vmem:[%s1 + $0x1518] sm:$0xf]
  %v1451 = vld [vmem:[%s1 + $0x151c] sm:$0xf]
  %v1452 = vld [vmem:[%s1 + $0x1520] sm:$0xf]
  %v1453 = vld [vmem:[%s1 + $0x1524] sm:$0xf]
  %v1454 = vld [vmem:[%s1 + $0x1528] sm:$0xf]
  %v1455 = vld [vmem:[%s1 + $0x152c] sm:$0xf]
  %v1456 = vld [vmem:[%s1 + $0x1530] sm:$0xf]
  %v1457 = vld [vmem:[%s1 + $0x1534] sm:$0xf]
  %v1458 = vld [vmem:[%s1 + $0x1538] sm:$0xf]
  %v1459 = vld [vmem:[%s1 + $0x153c] sm:$0xf]
  %v1460 = vld [vmem:[%s1 + $0x1540] sm:$0xf]
  %v1461 = vld [vmem:[%s1 + $0x1544] sm:$0xf]
  %v1462 = vld [vmem:[%s1 + $0x1548] sm:$0xf]
  %v1463 = vld [vmem:[%s1 + $0x154c] sm:$0xf]
  %v1464 = vld [vmem:[%s1 + $0x1550] sm:$0xf]
  %v1465 = vld [vmem:[%s1 + $0x1554] sm:$0xf]
  %v1466 = vld [vmem:[%s1 + $0x1558] sm:$0xf]
  %v1467 = vld [vmem:[%s1 + $0x155c] sm:$0xf]
  %v1468 = vld [vmem:[%s1 + $0x1560] sm:$0xf]
  %v1469 = vld [vmem:[%s1 + $0x1564] sm:$0xf]
  %v1470 = vld [vmem:[%s1 + $0x1568] sm:$0xf]
  %v1471 = vld [vmem:[%s1 + $0x156c] sm:$0xf]
  %v1472 = vld [vmem:[%s1 + $0x1570] sm:$0xf]
  %v1473 = vld [vmem:[%s1 + $0x1574] sm:$0xf]
  %v1474 = vld [vmem:[%s1 + $0x1578] sm:$0xf]
  %v1475 = vld [vmem:[%s1 + $0x157c] sm:$0xf]
  %v1476 = vld [vmem:[%s1 + $0x1580] sm:$0xf]
  %v1477 = vld [vmem:[%s1 + $0x1584] sm:$0xf]
  %v1478 = vld [vmem:[%s1 + $0x1588] sm:$0xf]
  %v1479 = vld [vmem:[%s1 + $0x158c] sm:$0xf]
  %v1480 = vld [vmem:[%s1 + $0x1590] sm:$0xf]
  %v1481 = vld [vmem:[%s1 + $0x1594] sm:$0xf]
  %v1482 = vld [vmem:[%s1 + $0x1598] sm:$0xf]
  %v1483 = vld [vmem:[%s1 + $0x159c] sm:$0xf]
  %v1484 = vld [vmem:[%s1 + $0x15a0] sm:$0xf]
  %v1485 = vld [vmem:[%s1 + $0x15a4] sm:$0xf]
  %v1486 = vld [vmem:[%s1 + $0x15a8] sm:$0xf]
  %v1487 = vld [vmem:[%s1 + $0x15ac] sm:$0xf]
  %v1488 = vld [vmem:[%s1 + $0x15b0] sm:$0xf]
  %v1489 = vld [vmem:[%s1 + $0x15b4] sm:$0xf]
  %v1490 = vld [vmem:[%s1 + $0x15b8] sm:$0xf]
  %v1491 = vld [vmem:[%s1 + $0x15bc] sm:$0xf]
  %v1492 = vld [vmem:[%s1 + $0x15c0] sm:$0xf]
  %v1493 = vld [vmem:[%s1 + $0x15c4] sm:$0xf]
  %v1494 = vld [vmem:[%s1 + $0x15c8] sm:$0xf]
  %v1495 = vld [vmem:[%s1 + $0x15cc] sm:$0xf]
  %v1496 = vld [vmem:[%s1 + $0x15d0] sm:$0xf]
  %v1497 = vld [vmem:[%s1 + $0x15d4] sm:$0xf]
  %v1498 = vld [vmem:[%s1 + $0x15d8] sm:$0xf]
  %v1499 = vld [vmem:[%s1 + $0x15dc] sm:$0xf]
  %v1500 = vld [vmem:[%s1 + $0x15e0] sm:$0xf]
  %v1501 = vld [vmem:[%s1 + $0x15e4] sm:$0xf]
  %v1502 = vld [vmem:[%s1 + $0x15e8] sm:$0xf]
  %v1503 = vld [vmem:[%s1 + $0x15ec] sm:$0xf]
  %v1504 = vld [vmem:[%s1 + $0x15f0] sm:$0xf]
  %v1505 = vld [vmem:[%s1 + $0x15f4] sm:$0xf]
  %v1506 = vld [vmem:[%s1 + $0x15f8] sm:$0xf]
  %v1507 = vld [vmem:[%s1 + $0x15fc] sm:$0xf]
  %v1508 = vld [vmem:[%s1 + $0x1600] sm:$0xf]
  %v1509 = vld [vmem:[%s1 + $0x1604] sm:$0xf]
  %v1510 = vld [vmem:[%s1 + $0x1608] sm:$0xf]
  %v1511 = vld [vmem:[%s1 + $0x160c] sm:$0xf]
  %v1512 = vld [vmem:[%s1 + $0x1610] sm:$0xf]
  %v1513 = vld [vmem:[%s1 + $0x1614] sm:$0xf]
  %v1514 = vld [vmem:[%s1 + $0x1618] sm:$0xf]
  %v1515 = vld [vmem:[%s1 + $0x161c] sm:$0xf]
  %v1516 = vld [vmem:[%s1 + $0x1620] sm:$0xf]
  %v1517 = vld [vmem:[%s1 + $0x1624] sm:$0xf]
  %v1518 = vld [vmem:[%s1 + $0x1628] sm:$0xf]
  %v1519 = vld [vmem:[%s1 + $0x162c] sm:$0xf]
  %v1520 = vld [vmem:[%s1 + $0x1630] sm:$0xf]
  %v1521 = vld [vmem:[%s1 + $0x1634] sm:$0xf]
  %v1522 = vld [vmem:[%s1 + $0x1638] sm:$0xf]
  %v1523 = vld [vmem:[%s1 + $0x163c] sm:$0xf]
  %v1524 = vld [vmem:[%s1 + $0x1640] sm:$0xf]
  %v1525 = vld [vmem:[%s1 + $0x1644] sm:$0xf]
  %v1526 = vld [vmem:[%s1 + $0x1648] sm:$0xf]
  %v1527 = vld [vmem:[%s1 + $0x164c] sm:$0xf]
  %v1528 = vld [vmem:[%s1 + $0x1650] sm:$0xf]
  %v1529 = vld [vmem:[%s1 + $0x1654] sm:$0xf]
  %v1530 = vld [vmem:[%s1 + $0x1658] sm:$0xf]
  %v1531 = vld [vmem:[%s1 + $0x165c] sm:$0xf]
  %v1532 = vld [vmem:[%s1 + $0x1660] sm:$0xf]
  %v1533 = vld [vmem:[%s1 + $0x1664] sm:$0xf]
  %v1534 = vld [vmem:[%s1 + $0x1668] sm:$0xf]
  %v1535 = vld [vmem:[%s1 + $0x166c] sm:$0xf]
  %v1536 = vld [vmem:[%s1 + $0x1670] sm:$0xf]
  %v1537 = vld [vmem:[%s1 + $0x1674] sm:$0xf]
  %v1538 = vld [vmem:[%s1 + $0x1678] sm:$0xf]
  %v1539 = vld [vmem:[%s1 + $0x167c] sm:$0xf]
  %v1540 = vld [vmem:[%s1 + $0x1680] sm:$0xf]
  %v1541 = vld [vmem:[%s1 + $0x1684] sm:$0xf]
  %v1542 = vld [vmem:[%s1 + $0x1688] sm:$0xf]
  %v1543 = vld [vmem:[%s1 + $0x168c] sm:$0xf]
  %v1544 = vld [vmem:[%s1 + $0x1690] sm:$0xf]
  %v1545 = vld [vmem:[%s1 + $0x1694] sm:$0xf]
  %v1546 = vld [vmem:[%s1 + $0x1698] sm:$0xf]
  %v1547 = vld [vmem:[%s1 + $0x169c] sm:$0xf]
  %v1548 = vld [vmem:[%s1 + $0x16a0] sm:$0xf]
  %v1549 = vld [vmem:[%s1 + $0x16a4] sm:$0xf]
  %v1550 = vld [vmem:[%s1 + $0x16a8] sm:$0xf]
  %v1551 = vld [vmem:[%s1 + $0x16ac] sm:$0xf]
  %v1552 = vld [vmem:[%s1 + $0x16b0] sm:$0xf]
  %v1553 = vld [vmem:[%s1 + $0x16b4] sm:$0xf]
  %v1554 = vld [vmem:[%s1 + $0x16b8] sm:$0xf]
  %v1555 = vld [vmem:[%s1 + $0x16bc] sm:$0xf]
  %v1556 = vld [vmem:[%s1 + $0x16c0] sm:$0xf]
  %v1557 = vld [vmem:[%s1 + $0x16c4] sm:$0xf]
  %v1558 = vld [vmem:[%s1 + $0x16c8] sm:$0xf]
  %v1559 = vld [vmem:[%s1 + $0x16cc] sm:$0xf]
  %v1560 = vld [vmem:[%s1 + $0x16d0] sm:$0xf]
  %v1561 = vld [vmem:[%s1 + $0x16d4] sm:$0xf]
  %v1562 = vld [vmem:[%s1 + $0x16d8] sm:$0xf]
  %v1563 = vld [vmem:[%s1 + $0x16dc] sm:$0xf]
  %v1564 = vld [vmem:[%s1 + $0x16e0] sm:$0xf]
  %v1565 = vld [vmem:[%s1 + $0x16e4] sm:$0xf]
  %v1566 = vld [vmem:[%s1 + $0x16e8] sm:$0xf]
  %v1567 = vld [vmem:[%s1 + $0x16ec] sm:$0xf]
  %v1568 = vld [vmem:[%s1 + $0x16f0] sm:$0xf]
  %v1569 = vld [vmem:[%s1 + $0x16f4] sm:$0xf]
  %v1570 = vld [vmem:[%s1 + $0x16f8] sm:$0xf]
  %v1571 = vld [vmem:[%s1 + $0x16fc] sm:$0xf]
  %v1572 = vld [vmem:[%s1 + $0x1700] sm:$0xf]
  %v1573 = vld [vmem:[%s1 + $0x1704] sm:$0xf]
  %v1574 = vld [vmem:[%s1 + $0x1708] sm:$0xf]
  %v1575 = vld [vmem:[%s1 + $0x170c] sm:$0xf]
  %v1576 = vld [vmem:[%s1 + $0x1710] sm:$0xf]
  %v1577 = vld [vmem:[%s1 + $0x1714] sm:$0xf]
  %v1578 = vld [vmem:[%s1 + $0x1718] sm:$0xf]
  %v1579 = vld [vmem:[%s1 + $0x171c] sm:$0xf]
  %v1580 = vld [vmem:[%s1 + $0x1720] sm:$0xf]
  %v1581 = vld [vmem:[%s1 + $0x1724] sm:$0xf]
  %v1582 = vld [vmem:[%s1 + $0x1728] sm:$0xf]
  %v1583 = vld [vmem:[%s1 + $0x172c] sm:$0xf]
  %v1584 = vld [vmem:[%s1 + $0x1730] sm:$0xf]
  %v1585 = vld [vmem:[%s1 + $0x1734] sm:$0xf]
  %v1586 = vld [vmem:[%s1 + $0x1738] sm:$0xf]
  %v1587 = vld [vmem:[%s1 + $0x173c] sm:$0xf]
  %v1588 = vld [vmem:[%s1 + $0x1740] sm:$0xf]
  %v1589 = vld [vmem:[%s1 + $0x1744] sm:$0xf]
  %v1590 = vld [vmem:[%s1 + $0x1748] sm:$0xf]
  %v1591 = vld [vmem:[%s1 + $0x174c] sm:$0xf]
  %v1592 = vld [vmem:[%s1 + $0x1750] sm:$0xf]
  %v1593 = vld [vmem:[%s1 + $0x1754] sm:$0xf]
  %v1594 = vld [vmem:[%s1 + $0x1758] sm:$0xf]
  %v1595 = vld [vmem:[%s1 + $0x175c] sm:$0xf]
  %v1596 = vld [vmem:[%s1 + $0x1760] sm:$0xf]
  %v1597 = vld [vmem:[%s1 + $0x1764] sm:$0xf]
  %v1598 = vld [vmem:[%s1 + $0x1768] sm:$0xf]
  %v1599 = vld [vmem:[%s1 + $0x176c] sm:$0xf]
  %v1600 = vld [vmem:[%s1 + $0x1770] sm:$0xf]
  %v1601 = vld [vmem:[%s1 + $0x1774] sm:$0xf]
  %v1602 = vld [vmem:[%s1 + $0x1778] sm:$0xf]
  %v1603 = vld [vmem:[%s1 + $0x177c] sm:$0xf]
  %v1604 = vld [vmem:[%s1 + $0x1780] sm:$0xf]
  %v1605 = vld [vmem:[%s1 + $0x1784] sm:$0xf]
  %v1606 = vld [vmem:[%s1 + $0x1788] sm:$0xf]
  %v1607 = vld [vmem:[%s1 + $0x178c] sm:$0xf]
  %v1608 = vld [vmem:[%s1 + $0x1790] sm:$0xf]
  %v1609 = vld [vmem:[%s1 + $0x1794] sm:$0xf]
  %v1610 = vld [vmem:[%s1 + $0x1798] sm:$0xf]
  %v1611 = vld [vmem:[%s1 + $0x179c] sm:$0xf]
  %v1612 = vld [vmem:[%s1 + $0x17a0] sm:$0xf]
  %v1613 = vld [vmem:[%s1 + $0x17a4] sm:$0xf]
  %v1614 = vld [vmem:[%s1 + $0x17a8] sm:$0xf]
  %v1615 = vld [vmem:[%s1 + $0x17ac] sm:$0xf]
  %v1616 = vld [vmem:[%s1 + $0x17b0] sm:$0xf]
  %v1617 = vld [vmem:[%s1 + $0x17b4] sm:$0xf]
  %v1618 = vld [vmem:[%s1 + $0x17b8] sm:$0xf]
  %v1619 = vld [vmem:[%s1 + $0x17bc] sm:$0xf]
  %v1620 = vld [vmem:[%s1 + $0x17c0] sm:$0xf]
  %v1621 = vld [vmem:[%s1 + $0x17c4] sm:$0xf]
  %v1622 = vld [vmem:[%s1 + $0x17c8] sm:$0xf]
  %v1623 = vld [vmem:[%s1 + $0x17cc] sm:$0xf]
  %v1624 = vld [vmem:[%s1 + $0x17d0] sm:$0xf]
  %v1625 = vld [vmem:[%s1 + $0x17d4] sm:$0xf]
  %v1626 = vld [vmem:[%s1 + $0x17d8] sm:$0xf]
  %v1627 = vld [vmem:[%s1 + $0x17dc] sm:$0xf]
  %v1628 = vld [vmem:[%s1 + $0x17e0] sm:$0xf]
  %v1629 = vld [vmem:[%s1 + $0x17e4] sm:$0xf]
  %v1630 = vld [vmem:[%s1 + $0x17e8] sm:$0xf]
  %v1631 = vld [vmem:[%s1 + $0x17ec] sm:$0xf]
  %v1632 = vld [vmem:[%s1 + $0x17f0] sm:$0xf]
  %v1633 = vld [vmem:[%s1 + $0x17f4] sm:$0xf]
  %v1634 = vld [vmem:[%s1 + $0x17f8] sm:$0xf]
  %v1635 = vld [vmem:[%s1 + $0x17fc] sm:$0xf]
  %v1636 = vld [vmem:[%s1 + $0x1800] sm:$0xf]
  %v1637 = vld [vmem:[%s1 + $0x1804] sm:$0xf]
  %v1638 = vld [vmem:[%s1 + $0x1808] sm:$0xf]
  %v1639 = vld [vmem:[%s1 + $0x180c] sm:$0xf]
  %v1640 = vld [vmem:[%s1 + $0x1810] sm:$0xf]
  %v1641 = vld [vmem:[%s1 + $0x1814] sm:$0xf]
  %v1642 = vld [vmem:[%s1 + $0x1818] sm:$0xf]
  %v1643 = vld [vmem:[%s1 + $0x181c] sm:$0xf]
  %v1644 = vld [vmem:[%s1 + $0x1820] sm:$0xf]
  %v1645 = vld [vmem:[%s1 + $0x1824] sm:$0xf]
  %v1646 = vld [vmem:[%s1 + $0x1828] sm:$0xf]
  %v1647 = vld [vmem:[%s1 + $0x182c] sm:$0xf]
  %v1648 = vld [vmem:[%s1 + $0x1830] sm:$0xf]
  %v1649 = vld [vmem:[%s1 + $0x1834] sm:$0xf]
  %v1650 = vld [vmem:[%s1 + $0x1838] sm:$0xf]
  %v1651 = vld [vmem:[%s1 + $0x183c] sm:$0xf]
  %v1652 = vld [vmem:[%s1 + $0x1840] sm:$0xf]
  %v1653 = vld [vmem:[%s1 + $0x1844] sm:$0xf]
  %v1654 = vld [vmem:[%s1 + $0x1848] sm:$0xf]
  %v1655 = vld [vmem:[%s1 + $0x184c] sm:$0xf]
  %v1656 = vld [vmem:[%s1 + $0x1850] sm:$0xf]
  %v1657 = vld [vmem:[%s1 + $0x1854] sm:$0xf]
  %v1658 = vld [vmem:[%s1 + $0x1858] sm:$0xf]
  %v1659 = vld [vmem:[%s1 + $0x185c] sm:$0xf]
  %v1660 = vld [vmem:[%s1 + $0x1860] sm:$0xf]
  %v1661 = vld [vmem:[%s1 + $0x1864] sm:$0xf]
  %v1662 = vld [vmem:[%s1 + $0x1868] sm:$0xf]
  %v1663 = vld [vmem:[%s1 + $0x186c] sm:$0xf]
  %v1664 = vld [vmem:[%s1 + $0x1870] sm:$0xf]
  %v1665 = vld [vmem:[%s1 + $0x1874] sm:$0xf]
  %v1666 = vld [vmem:[%s1 + $0x1878] sm:$0xf]
  %v1667 = vld [vmem:[%s1 + $0x187c] sm:$0xf]
  %v1668 = vld [vmem:[%s1 + $0x1880] sm:$0xf]
  %v1669 = vld [vmem:[%s1 + $0x1884] sm:$0xf]
  %v1670 = vld [vmem:[%s1 + $0x1888] sm:$0xf]
  %v1671 = vld [vmem:[%s1 + $0x188c] sm:$0xf]
  %v1672 = vld [vmem:[%s1 + $0x1890] sm:$0xf]
  %v1673 = vld [vmem:[%s1 + $0x1894] sm:$0xf]
  %v1674 = vld [vmem:[%s1 + $0x1898] sm:$0xf]
  %v1675 = vld [vmem:[%s1 + $0x189c] sm:$0xf]
  %v1676 = vld [vmem:[%s1 + $0x18a0] sm:$0xf]
  %v1677 = vld [vmem:[%s1 + $0x18a4] sm:$0xf]
  %v1678 = vld [vmem:[%s1 + $0x18a8] sm:$0xf]
  %v1679 = vld [vmem:[%s1 + $0x18ac] sm:$0xf]
  %v1680 = vld [vmem:[%s1 + $0x18b0] sm:$0xf]
  %v1681 = vld [vmem:[%s1 + $0x18b4] sm:$0xf]
  %v1682 = vld [vmem:[%s1 + $0x18b8] sm:$0xf]
  %v1683 = vld [vmem:[%s1 + $0x18bc] sm:$0xf]
  %v1684 = vld [vmem:[%s1 + $0x18c0] sm:$0xf]
  %v1685 = vld [vmem:[%s1 + $0x18c4] sm:$0xf]
  %v1686 = vld [vmem:[%s1 + $0x18c8] sm:$0xf]
  %v1687 = vld [vmem:[%s1 + $0x18cc] sm:$0xf]
  %v1688 = vld [vmem:[%s1 + $0x18d0] sm:$0xf]
  %v1689 = vld [vmem:[%s1 + $0x18d4] sm:$0xf]
  %v1690 = vld [vmem:[%s1 + $0x18d8] sm:$0xf]
  %v1691 = vld [vmem:[%s1 + $0x18dc] sm:$0xf]
  %v1692 = vld [vmem:[%s1 + $0x18e0] sm:$0xf]
  %v1693 = vld [vmem:[%s1 + $0x18e4] sm:$0xf]
  %v1694 = vld [vmem:[%s1 + $0x18e8] sm:$0xf]
  %v1695 = vld [vmem:[%s1 + $0x18ec] sm:$0xf]
  %v1696 = vld [vmem:[%s1 + $0x18f0] sm:$0xf]
  %v1697 = vld [vmem:[%s1 + $0x18f4] sm:$0xf]
  %v1698 = vld [vmem:[%s1 + $0x18f8] sm:$0xf]
  %v1699 = vld [vmem:[%s1 + $0x18fc] sm:$0xf]
  %v1700 = vld [vmem:[%s1 + $0x1900] sm:$0xf]
  %v1701 = vld [vmem:[%s1 + $0x1904] sm:$0xf]
  %v1702 = vld [vmem:[%s1 + $0x1908] sm:$0xf]
  %v1703 = vld [vmem:[%s1 + $0x190c] sm:$0xf]
  %v1704 = vld [vmem:[%s1 + $0x1910] sm:$0xf]
  %v1705 = vld [vmem:[%s1 + $0x1914] sm:$0xf]
  %v1706 = vld [vmem:[%s1 + $0x1918] sm:$0xf]
  %v1707 = vld [vmem:[%s1 + $0x191c] sm:$0xf]
  %v1708 = vld [vmem:[%s1 + $0x1920] sm:$0xf]
  %v1709 = vld [vmem:[%s1 + $0x1924] sm:$0xf]
  %v1710 = vld [vmem:[%s1 + $0x1928] sm:$0xf]
  %v1711 = vld [vmem:[%s1 + $0x192c] sm:$0xf]
  %v1712 = vld [vmem:[%s1 + $0x1930] sm:$0xf]
  %v1713 = vld [vmem:[%s1 + $0x1934] sm:$0xf]
  %v1714 = vld [vmem:[%s1 + $0x1938] sm:$0xf]
  %v1715 = vld [vmem:[%s1 + $0x193c] sm:$0xf]
  %v1716 = vld [vmem:[%s1 + $0x1940] sm:$0xf]
  %v1717 = vld [vmem:[%s1 + $0x1944] sm:$0xf]
  %v1718 = vld [vmem:[%s1 + $0x1948] sm:$0xf]
  %v1719 = vld [vmem:[%s1 + $0x194c] sm:$0xf]
  %v1720 = vld [vmem:[%s1 + $0x1950] sm:$0xf]
  %v1721 = vld [vmem:[%s1 + $0x1954] sm:$0xf]
  %v1722 = vld [vmem:[%s1 + $0x1958] sm:$0xf]
  %v1723 = vld [vmem:[%s1 + $0x195c] sm:$0xf]
  %v1724 = vld [vmem:[%s1 + $0x1960] sm:$0xf]
  %v1725 = vld [vmem:[%s1 + $0x1964] sm:$0xf]
  %v1726 = vld [vmem:[%s1 + $0x1968] sm:$0xf]
  %v1727 = vld [vmem:[%s1 + $0x196c] sm:$0xf]
  %v1728 = vld [vmem:[%s1 + $0x1970] sm:$0xf]
  %v1729 = vld [vmem:[%s1 + $0x1974] sm:$0xf]
  %v1730 = vld [vmem:[%s1 + $0x1978] sm:$0xf]
  %v1731 = vld [vmem:[%s1 + $0x197c] sm:$0xf]
  %v1732 = vld [vmem:[%s1 + $0x1980] sm:$0xf]
  %v1733 = vld [vmem:[%s1 + $0x1984] sm:$0xf]
  %v1734 = vld [vmem:[%s1 + $0x1988] sm:$0xf]
  %v1735 = vld [vmem:[%s1 + $0x198c] sm:$0xf]
  %v1736 = vld [vmem:[%s1 + $0x1990] sm:$0xf]
  %v1737 = vld [vmem:[%s1 + $0x1994] sm:$0xf]
  %v1738 = vld [vmem:[%s1 + $0x1998] sm:$0xf]
  %v1739 = vld [vmem:[%s1 + $0x199c] sm:$0xf]
  %v1740 = vld [vmem:[%s1 + $0x19a0] sm:$0xf]
  %v1741 = vld [vmem:[%s1 + $0x19a4] sm:$0xf]
  %v1742 = vld [vmem:[%s1 + $0x19a8] sm:$0xf]
  %v1743 = vld [vmem:[%s1 + $0x19ac] sm:$0xf]
  %v1744 = vld [vmem:[%s1 + $0x19b0] sm:$0xf]
  %v1745 = vld [vmem:[%s1 + $0x19b4] sm:$0xf]
  %v1746 = vld [vmem:[%s1 + $0x19b8] sm:$0xf]
  %v1747 = vld [vmem:[%s1 + $0x19bc] sm:$0xf]
  %v1748 = vld [vmem:[%s1 + $0x19c0] sm:$0xf]
  %v1749 = vld [vmem:[%s1 + $0x19c4] sm:$0xf]
  %v1750 = vld [vmem:[%s1 + $0x19c8] sm:$0xf]
  %v1751 = vld [vmem:[%s1 + $0x19cc] sm:$0xf]
  %v1752 = vld [vmem:[%s1 + $0x19d0] sm:$0xf]
  %v1753 = vld [vmem:[%s1 + $0x19d4] sm:$0xf]
  %v1754 = vld [vmem:[%s1 + $0x19d8] sm:$0xf]
  %v1755 = vld [vmem:[%s1 + $0x19dc] sm:$0xf]
  %v1756 = vld [vmem:[%s1 + $0x19e0] sm:$0xf]
  %v1757 = vld [vmem:[%s1 + $0x19e4] sm:$0xf]
  %v1758 = vld [vmem:[%s1 + $0x19e8] sm:$0xf]
  %v1759 = vld [vmem:[%s1 + $0x19ec] sm:$0xf]
  %v1760 = vld [vmem:[%s1 + $0x19f0] sm:$0xf]
  %v1761 = vld [vmem:[%s1 + $0x19f4] sm:$0xf]
  %v1762 = vld [vmem:[%s1 + $0x19f8] sm:$0xf]
  %v1763 = vld [vmem:[%s1 + $0x19fc] sm:$0xf]
  %v1764 = vld [vmem:[%s1 + $0x1a00] sm:$0xf]
  %v1765 = vld [vmem:[%s1 + $0x1a04] sm:$0xf]
  %v1766 = vld [vmem:[%s1 + $0x1a08] sm:$0xf]
  %v1767 = vld [vmem:[%s1 + $0x1a0c] sm:$0xf]
  %v1768 = vld [vmem:[%s1 + $0x1a10] sm:$0xf]
  %v1769 = vld [vmem:[%s1 + $0x1a14] sm:$0xf]
  %v1770 = vld [vmem:[%s1 + $0x1a18] sm:$0xf]
  %v1771 = vld [vmem:[%s1 + $0x1a1c] sm:$0xf]
  %v1772 = vld [vmem:[%s1 + $0x1a20] sm:$0xf]
  %v1773 = vld [vmem:[%s1 + $0x1a24] sm:$0xf]
  %v1774 = vld [vmem:[%s1 + $0x1a28] sm:$0xf]
  %v1775 = vld [vmem:[%s1 + $0x1a2c] sm:$0xf]
  %v1776 = vld [vmem:[%s1 + $0x1a30] sm:$0xf]
  %v1777 = vld [vmem:[%s1 + $0x1a34] sm:$0xf]
  %v1778 = vld [vmem:[%s1 + $0x1a38] sm:$0xf]
  %v1779 = vld [vmem:[%s1 + $0x1a3c] sm:$0xf]
  %v1780 = vld [vmem:[%s1 + $0x1a40] sm:$0xf]
  %v1781 = vld [vmem:[%s1 + $0x1a44] sm:$0xf]
  %v1782 = vld [vmem:[%s1 + $0x1a48] sm:$0xf]
  %v1783 = vld [vmem:[%s1 + $0x1a4c] sm:$0xf]
  %v1784 = vld [vmem:[%s1 + $0x1a50] sm:$0xf]
  %v1785 = vld [vmem:[%s1 + $0x1a54] sm:$0xf]
  %v1786 = vld [vmem:[%s1 + $0x1a58] sm:$0xf]
  %v1787 = vld [vmem:[%s1 + $0x1a5c] sm:$0xf]
  %v1788 = vld [vmem:[%s1 + $0x1a60] sm:$0xf]
  %v1789 = vld [vmem:[%s1 + $0x1a64] sm:$0xf]
  %v1790 = vld [vmem:[%s1 + $0x1a68] sm:$0xf]
  %v1791 = vld [vmem:[%s1 + $0x1a6c] sm:$0xf]
  %v1792 = vld [vmem:[%s1 + $0x1a70] sm:$0xf]
  %v1793 = vld [vmem:[%s1 + $0x1a74] sm:$0xf]
  %v1794 = vld [vmem:[%s1 + $0x1a78] sm:$0xf]
  %v1795 = vld [vmem:[%s1 + $0x1a7c] sm:$0xf]
  %v1796 = vld [vmem:[%s1 + $0x1a80] sm:$0xf]
  %v1797 = vld [vmem:[%s1 + $0x1a84] sm:$0xf]
  %v1798 = vld [vmem:[%s1 + $0x1a88] sm:$0xf]
  %v1799 = vld [vmem:[%s1 + $0x1a8c] sm:$0xf]
  %v1800 = vld [vmem:[%s1 + $0x1a90] sm:$0xf]
  %v1801 = vld [vmem:[%s1 + $0x1a94] sm:$0xf]
  %v1802 = vld [vmem:[%s1 + $0x1a98] sm:$0xf]
  %v1803 = vld [vmem:[%s1 + $0x1a9c] sm:$0xf]
  %v1804 = vld [vmem:[%s1 + $0x1aa0] sm:$0xf]
  %v1805 = vld [vmem:[%s1 + $0x1aa4] sm:$0xf]
  %v1806 = vld [vmem:[%s1 + $0x1aa8] sm:$0xf]
  %v1807 = vld [vmem:[%s1 + $0x1aac] sm:$0xf]
  %v1808 = vld [vmem:[%s1 + $0x1ab0] sm:$0xf]
  %v1809 = vld [vmem:[%s1 + $0x1ab4] sm:$0xf]
  %v1810 = vld [vmem:[%s1 + $0x1ab8] sm:$0xf]
  %v1811 = vld [vmem:[%s1 + $0x1abc] sm:$0xf]
  %v1812 = vld [vmem:[%s1 + $0x1ac0] sm:$0xf]
  %v1813 = vld [vmem:[%s1 + $0x1ac4] sm:$0xf]
  %v1814 = vld [vmem:[%s1 + $0x1ac8] sm:$0xf]
  %v1815 = vld [vmem:[%s1 + $0x1acc] sm:$0xf]
  %v1816 = vld [vmem:[%s1 + $0x1ad0] sm:$0xf]
  %v1817 = vld [vmem:[%s1 + $0x1ad4] sm:$0xf]
  %v1818 = vld [vmem:[%s1 + $0x1ad8] sm:$0xf]
  %v1819 = vld [vmem:[%s1 + $0x1adc] sm:$0xf]
  %v1820 = vld [vmem:[%s1 + $0x1ae0] sm:$0xf]
  %v1821 = vld [vmem:[%s1 + $0x1ae4] sm:$0xf]
  %v1822 = vld [vmem:[%s1 + $0x1ae8] sm:$0xf]
  %v1823 = vld [vmem:[%s1 + $0x1aec] sm:$0xf]
  %v1824 = vld [vmem:[%s1 + $0x1af0] sm:$0xf]
  %v1825 = vld [vmem:[%s1 + $0x1af4] sm:$0xf]
  %v1826 = vld [vmem:[%s1 + $0x1af8] sm:$0xf]
  %v1827 = vld [vmem:[%s1 + $0x1afc] sm:$0xf]
  %v1828 = vld [vmem:[%s1 + $0x1b00] sm:$0xf]
  %v1829 = vld [vmem:[%s1 + $0x1b04] sm:$0xf]
  %v1830 = vld [vmem:[%s1 + $0x1b08] sm:$0xf]
  %v1831 = vld [vmem:[%s1 + $0x1b0c] sm:$0xf]
  %v1832 = vld [vmem:[%s1 + $0x1b10] sm:$0xf]
  %v1833 = vld [vmem:[%s1 + $0x1b14] sm:$0xf]
  %v1834 = vld [vmem:[%s1 + $0x1b18] sm:$0xf]
  %v1835 = vld [vmem:[%s1 + $0x1b1c] sm:$0xf]
  %v1836 = vld [vmem:[%s1 + $0x1b20] sm:$0xf]
  %v1837 = vld [vmem:[%s1 + $0x1b24] sm:$0xf]
  %v1838 = vld [vmem:[%s1 + $0x1b28] sm:$0xf]
  %v1839 = vld [vmem:[%s1 + $0x1b2c] sm:$0xf]
  %v1840 = vld [vmem:[%s1 + $0x1b30] sm:$0xf]
  %v1841 = vld [vmem:[%s1 + $0x1b34] sm:$0xf]
  %v1842 = vld [vmem:[%s1 + $0x1b38] sm:$0xf]
  %v1843 = vld [vmem:[%s1 + $0x1b3c] sm:$0xf]
  %v1844 = vld [vmem:[%s1 + $0x1b40] sm:$0xf]
  %v1845 = vld [vmem:[%s1 + $0x1b44] sm:$0xf]
  %v1846 = vld [vmem:[%s1 + $0x1b48] sm:$0xf]
  %v1847 = vld [vmem:[%s1 + $0x1b4c] sm:$0xf]
  %v1848 = vld [vmem:[%s1 + $0x1b50] sm:$0xf]
  %v1849 = vld [vmem:[%s1 + $0x1b54] sm:$0xf]
  %v1850 = vld [vmem:[%s1 + $0x1b58] sm:$0xf]
  %v1851 = vld [vmem:[%s1 + $0x1b5c] sm:$0xf]
  %v1852 = vld [vmem:[%s1 + $0x1b60] sm:$0xf]
  %v1853 = vld [vmem:[%s1 + $0x1b64] sm:$0xf]
  %v1854 = vld [vmem:[%s1 + $0x1b68] sm:$0xf]
  %v1855 = vld [vmem:[%s1 + $0x1b6c] sm:$0xf]
  %v1856 = vld [vmem:[%s1 + $0x1b70] sm:$0xf]
  %v1857 = vld [vmem:[%s1 + $0x1b74] sm:$0xf]
  %v1858 = vld [vmem:[%s1 + $0x1b78] sm:$0xf]
  %v1859 = vld [vmem:[%s1 + $0x1b7c] sm:$0xf]
  %v1860 = vld [vmem:[%s1 + $0x1b80] sm:$0xf]
  %v1861 = vld [vmem:[%s1 + $0x1b84] sm:$0xf]
  %v1862 = vld [vmem:[%s1 + $0x1b88] sm:$0xf]
  %v1863 = vld [vmem:[%s1 + $0x1b8c] sm:$0xf]
  %v1864 = vld [vmem:[%s1 + $0x1b90] sm:$0xf]
  %v1865 = vld [vmem:[%s1 + $0x1b94] sm:$0xf]
  %v1866 = vld [vmem:[%s1 + $0x1b98] sm:$0xf]
  %v1867 = vld [vmem:[%s1 + $0x1b9c] sm:$0xf]
  %v1868 = vld [vmem:[%s1 + $0x1ba0] sm:$0xf]
  %v1869 = vld [vmem:[%s1 + $0x1ba4] sm:$0xf]
  %v1870 = vld [vmem:[%s1 + $0x1ba8] sm:$0xf]
  %v1871 = vld [vmem:[%s1 + $0x1bac] sm:$0xf]
  %v1872 = vld [vmem:[%s1 + $0x1bb0] sm:$0xf]
  %v1873 = vld [vmem:[%s1 + $0x1bb4] sm:$0xf]
  %v1874 = vld [vmem:[%s1 + $0x1bb8] sm:$0xf]
  %v1875 = vld [vmem:[%s1 + $0x1bbc] sm:$0xf]
  %v1876 = vld [vmem:[%s1 + $0x1bc0] sm:$0xf]
  %v1877 = vld [vmem:[%s1 + $0x1bc4] sm:$0xf]
  %v1878 = vld [vmem:[%s1 + $0x1bc8] sm:$0xf]
  %v1879 = vld [vmem:[%s1 + $0x1bcc] sm:$0xf]
  %v1880 = vld [vmem:[%s1 + $0x1bd0] sm:$0xf]
  %v1881 = vld [vmem:[%s1 + $0x1bd4] sm:$0xf]
  %v1882 = vld [vmem:[%s1 + $0x1bd8] sm:$0xf]
  %v1883 = vld [vmem:[%s1 + $0x1bdc] sm:$0xf]
  %v1884 = vld [vmem:[%s1 + $0x1be0] sm:$0xf]
  %v1885 = vld [vmem:[%s1 + $0x1be4] sm:$0xf]
  %v1886 = vld [vmem:[%s1 + $0x1be8] sm:$0xf]
  %v1887 = vld [vmem:[%s1 + $0x1bec] sm:$0xf]
  %v1888 = vld [vmem:[%s1 + $0x1bf0] sm:$0xf]
  %v1889 = vld [vmem:[%s1 + $0x1bf4] sm:$0xf]
  %v1890 = vld [vmem:[%s1 + $0x1bf8] sm:$0xf]
  %v1891 = vld [vmem:[%s1 + $0x1bfc] sm:$0xf]
  %v1892 = vld [vmem:[%s1 + $0x1c00] sm:$0xf]
  %v1893 = vld [vmem:[%s1 + $0x1c04] sm:$0xf]
  %v1894 = vld [vmem:[%s1 + $0x1c08] sm:$0xf]
  %v1895 = vld [vmem:[%s1 + $0x1c0c] sm:$0xf]
  %v1896 = vld [vmem:[%s1 + $0x1c10] sm:$0xf]
  %v1897 = vld [vmem:[%s1 + $0x1c14] sm:$0xf]
  %v1898 = vld [vmem:[%s1 + $0x1c18] sm:$0xf]
  %v1899 = vld [vmem:[%s1 + $0x1c1c] sm:$0xf]
  %v1900 = vld [vmem:[%s1 + $0x1c20] sm:$0xf]
  %v1901 = vld [vmem:[%s1 + $0x1c24] sm:$0xf]
  %v1902 = vld [vmem:[%s1 + $0x1c28] sm:$0xf]
  %v1903 = vld [vmem:[%s1 + $0x1c2c] sm:$0xf]
  %v1904 = vld [vmem:[%s1 + $0x1c30] sm:$0xf]
  %v1905 = vld [vmem:[%s1 + $0x1c34] sm:$0xf]
  %v1906 = vld [vmem:[%s1 + $0x1c38] sm:$0xf]
  %v1907 = vld [vmem:[%s1 + $0x1c3c] sm:$0xf]
  %v1908 = vld [vmem:[%s1 + $0x1c40] sm:$0xf]
  %v1909 = vld [vmem:[%s1 + $0x1c44] sm:$0xf]
  %v1910 = vld [vmem:[%s1 + $0x1c48] sm:$0xf]
  %v1911 = vld [vmem:[%s1 + $0x1c4c] sm:$0xf]
  %v1912 = vld [vmem:[%s1 + $0x1c50] sm:$0xf]
  %v1913 = vld [vmem:[%s1 + $0x1c54] sm:$0xf]
  %v1914 = vld [vmem:[%s1 + $0x1c58] sm:$0xf]
  %v1915 = vld [vmem:[%s1 + $0x1c5c] sm:$0xf]
  %v1916 = vld [vmem:[%s1 + $0x1c60] sm:$0xf]
  %v1917 = vld [vmem:[%s1 + $0x1c64] sm:$0xf]
  %v1918 = vld [vmem:[%s1 + $0x1c68] sm:$0xf]
  %v1919 = vld [vmem:[%s1 + $0x1c6c] sm:$0xf]
  %v1920 = vld [vmem:[%s1 + $0x1c70] sm:$0xf]
  %v1921 = vld [vmem:[%s1 + $0x1c74] sm:$0xf]
  %v1922 = vld [vmem:[%s1 + $0x1c78] sm:$0xf]
  %v1923 = vld [vmem:[%s1 + $0x1c7c] sm:$0xf]
  %v1924 = vld [vmem:[%s1 + $0x1c80] sm:$0xf]
  %v1925 = vld [vmem:[%s1 + $0x1c84] sm:$0xf]
  %v1926 = vld [vmem:[%s1 + $0x1c88] sm:$0xf]
  %v1927 = vld [vmem:[%s1 + $0x1c8c] sm:$0xf]
  %v1928 = vld [vmem:[%s1 + $0x1c90] sm:$0xf]
  %v1929 = vld [vmem:[%s1 + $0x1c94] sm:$0xf]
  %v1930 = vld [vmem:[%s1 + $0x1c98] sm:$0xf]
  %v1931 = vld [vmem:[%s1 + $0x1c9c] sm:$0xf]
  %v1932 = vld [vmem:[%s1 + $0x1ca0] sm:$0xf]
  %v1933 = vld [vmem:[%s1 + $0x1ca4] sm:$0xf]
  %v1934 = vld [vmem:[%s1 + $0x1ca8] sm:$0xf]
  %v1935 = vld [vmem:[%s1 + $0x1cac] sm:$0xf]
  %v1936 = vld [vmem:[%s1 + $0x1cb0] sm:$0xf]
  %v1937 = vld [vmem:[%s1 + $0x1cb4] sm:$0xf]
  %v1938 = vld [vmem:[%s1 + $0x1cb8] sm:$0xf]
  %v1939 = vld [vmem:[%s1 + $0x1cbc] sm:$0xf]
  %v1940 = vld [vmem:[%s1 + $0x1cc0] sm:$0xf]
  %v1941 = vld [vmem:[%s1 + $0x1cc4] sm:$0xf]
  %v1942 = vld [vmem:[%s1 + $0x1cc8] sm:$0xf]
  %v1943 = vld [vmem:[%s1 + $0x1ccc] sm:$0xf]
  %v1944 = vld [vmem:[%s1 + $0x1cd0] sm:$0xf]
  %v1945 = vld [vmem:[%s1 + $0x1cd4] sm:$0xf]
  %v1946 = vld [vmem:[%s1 + $0x1cd8] sm:$0xf]
  %v1947 = vld [vmem:[%s1 + $0x1cdc] sm:$0xf]
  %v1948 = vld [vmem:[%s1 + $0x1ce0] sm:$0xf]
  %v1949 = vld [vmem:[%s1 + $0x1ce4] sm:$0xf]
  %v1950 = vld [vmem:[%s1 + $0x1ce8] sm:$0xf]
  %v1951 = vld [vmem:[%s1 + $0x1cec] sm:$0xf]
  %v1952 = vld [vmem:[%s1 + $0x1cf0] sm:$0xf]
  %v1953 = vld [vmem:[%s1 + $0x1cf4] sm:$0xf]
  %v1954 = vld [vmem:[%s1 + $0x1cf8] sm:$0xf]
  %v1955 = vld [vmem:[%s1 + $0x1cfc] sm:$0xf]
  %v1956 = vld [vmem:[%s1 + $0x1d00] sm:$0xf]
  %v1957 = vld [vmem:[%s1 + $0x1d04] sm:$0xf]
  %v1958 = vld [vmem:[%s1 + $0x1d08] sm:$0xf]
  %v1959 = vld [vmem:[%s1 + $0x1d0c] sm:$0xf]
  %v1960 = vld [vmem:[%s1 + $0x1d10] sm:$0xf]
  %v1961 = vld [vmem:[%s1 + $0x1d14] sm:$0xf]
  %v1962 = vld [vmem:[%s1 + $0x1d18] sm:$0xf]
  %v1963 = vld [vmem:[%s1 + $0x1d1c] sm:$0xf]
  %v1964 = vld [vmem:[%s1 + $0x1d20] sm:$0xf]
  %v1965 = vld [vmem:[%s1 + $0x1d24] sm:$0xf]
  %v1966 = vld [vmem:[%s1 + $0x1d28] sm:$0xf]
  %v1967 = vld [vmem:[%s1 + $0x1d2c] sm:$0xf]
  %v1968 = vld [vmem:[%s1 + $0x1d30] sm:$0xf]
  %v1969 = vld [vmem:[%s1 + $0x1d34] sm:$0xf]
  %v1970 = vld [vmem:[%s1 + $0x1d38] sm:$0xf]
  %v1971 = vld [vmem:[%s1 + $0x1d3c] sm:$0xf]
  %v1972 = vld [vmem:[%s1 + $0x1d40] sm:$0xf]
  %v1973 = vld [vmem:[%s1 + $0x1d44] sm:$0xf]
  %v1974 = vld [vmem:[%s1 + $0x1d48] sm:$0xf]
  %v1975 = vld [vmem:[%s1 + $0x1d4c] sm:$0xf]
  %v1976 = vld [vmem:[%s1 + $0x1d50] sm:$0xf]
  %v1977 = vld [vmem:[%s1 + $0x1d54] sm:$0xf]
  %v1978 = vld [vmem:[%s1 + $0x1d58] sm:$0xf]
  %v1979 = vld [vmem:[%s1 + $0x1d5c] sm:$0xf]
  %v1980 = vld [vmem:[%s1 + $0x1d60] sm:$0xf]
  %v1981 = vld [vmem:[%s1 + $0x1d64] sm:$0xf]
  %v1982 = vld [vmem:[%s1 + $0x1d68] sm:$0xf]
  %v1983 = vld [vmem:[%s1 + $0x1d6c] sm:$0xf]
  %v1984 = vld [vmem:[%s1 + $0x1d70] sm:$0xf]
  %v1985 = vld [vmem:[%s1 + $0x1d74] sm:$0xf]
  %v1986 = vld [vmem:[%s1 + $0x1d78] sm:$0xf]
  %v1987 = vld [vmem:[%s1 + $0x1d7c] sm:$0xf]
  %v1988 = vld [vmem:[%s1 + $0x1d80] sm:$0xf]
  %v1989 = vld [vmem:[%s1 + $0x1d84] sm:$0xf]
  %v1990 = vld [vmem:[%s1 + $0x1d88] sm:$0xf]
  %v1991 = vld [vmem:[%s1 + $0x1d8c] sm:$0xf]
  %v1992 = vld [vmem:[%s1 + $0x1d90] sm:$0xf]
  %v1993 = vld [vmem:[%s1 + $0x1d94] sm:$0xf]
  %v1994 = vld [vmem:[%s1 + $0x1d98] sm:$0xf]
  %v1995 = vld [vmem:[%s1 + $0x1d9c] sm:$0xf]
  %v1996 = vld [vmem:[%s1 + $0x1da0] sm:$0xf]
  %v1997 = vld [vmem:[%s1 + $0x1da4] sm:$0xf]
  %v1998 = vld [vmem:[%s1 + $0x1da8] sm:$0xf]
  %v1999 = vld [vmem:[%s1 + $0x1dac] sm:$0xf]
  %v2000 = vld [vmem:[%s1 + $0x1db0] sm:$0xf]
  %v2001 = vld [vmem:[%s1 + $0x1db4] sm:$0xf]
  %v2002 = vld [vmem:[%s1 + $0x1db8] sm:$0xf]
  %v2003 = vld [vmem:[%s1 + $0x1dbc] sm:$0xf]
  %v2004 = vld [vmem:[%s1 + $0x1dc0] sm:$0xf]
  %v2005 = vld [vmem:[%s1 + $0x1dc4] sm:$0xf]
  %v2006 = vld [vmem:[%s1 + $0x1dc8] sm:$0xf]
  %v2007 = vld [vmem:[%s1 + $0x1dcc] sm:$0xf]
  %v2008 = vld [vmem:[%s1 + $0x1dd0] sm:$0xf]
  %v2009 = vld [vmem:[%s1 + $0x1dd4] sm:$0xf]
  %v2010 = vld [vmem:[%s1 + $0x1dd8] sm:$0xf]
  %v2011 = vld [vmem:[%s1 + $0x1ddc] sm:$0xf]
  %v2012 = vld [vmem:[%s1 + $0x1de0] sm:$0xf]
  %v2013 = vld [vmem:[%s1 + $0x1de4] sm:$0xf]
  %v2014 = vld [vmem:[%s1 + $0x1de8] sm:$0xf]
  %v2015 = vld [vmem:[%s1 + $0x1dec] sm:$0xf]
  %v2016 = vld [vmem:[%s1 + $0x1df0] sm:$0xf]
  %v2017 = vld [vmem:[%s1 + $0x1df4] sm:$0xf]
  %v2018 = vld [vmem:[%s1 + $0x1df8] sm:$0xf]
  %v2019 = vld [vmem:[%s1 + $0x1dfc] sm:$0xf]
  %v2020 = vld [vmem:[%s1 + $0x1e00] sm:$0xf]
  %v2021 = vld [vmem:[%s1 + $0x1e04] sm:$0xf]
  %v2022 = vld [vmem:[%s1 + $0x1e08] sm:$0xf]
  %v2023 = vld [vmem:[%s1 + $0x1e0c] sm:$0xf]
  %v2024 = vld [vmem:[%s1 + $0x1e10] sm:$0xf]
  %v2025 = vld [vmem:[%s1 + $0x1e14] sm:$0xf]
  %v2026 = vld [vmem:[%s1 + $0x1e18] sm:$0xf]
  %v2027 = vld [vmem:[%s1 + $0x1e1c] sm:$0xf]
  %v2028 = vld [vmem:[%s1 + $0x1e20] sm:$0xf]
  %v2029 = vld [vmem:[%s1 + $0x1e24] sm:$0xf]
  %v2030 = vld [vmem:[%s1 + $0x1e28] sm:$0xf]
  %v2031 = vld [vmem:[%s1 + $0x1e2c] sm:$0xf]
  %v2032 = vld [vmem:[%s1 + $0x1e30] sm:$0xf]
  %v2033 = vld [vmem:[%s1 + $0x1e34] sm:$0xf]
  %v2034 = vld [vmem:[%s1 + $0x1e38] sm:$0xf]
  %v2035 = vld [vmem:[%s1 + $0x1e3c] sm:$0xf]
  %v2036 = vld [vmem:[%s1 + $0x1e40] sm:$0xf]
  %v2037 = vld [vmem:[%s1 + $0x1e44] sm:$0xf]
  %v2038 = vld [vmem:[%s1 + $0x1e48] sm:$0xf]
  %v2039 = vld [vmem:[%s1 + $0x1e4c] sm:$0xf]
  %v2040 = vld [vmem:[%s1 + $0x1e50] sm:$0xf]
  %v2041 = vld [vmem:[%s1 + $0x1e54] sm:$0xf]
  %v2042 = vld [vmem:[%s1 + $0x1e58] sm:$0xf]
  %v2043 = vld [vmem:[%s1 + $0x1e5c] sm:$0xf]
  %v2044 = vld [vmem:[%s1 + $0x1e60] sm:$0xf]
  %v2045 = vld [vmem:[%s1 + $0x1e64] sm:$0xf]
  %v2046 = vld [vmem:[%s1 + $0x1e68] sm:$0xf]
  %v2047 = vld [vmem:[%s1 + $0x1e6c] sm:$0xf]
  %v2048 = vld [vmem:[%s1 + $0x1e70] sm:$0xf]
  %v2049 = vld [vmem:[%s1 + $0x1e74] sm:$0xf]
  %v2050 = vld [vmem:[%s1 + $0x1e78] sm:$0xf]
  %v2051 = vld [vmem:[%s1 + $0x1e7c] sm:$0xf]
  %v2052 = vld [vmem:[%s1 + $0x1e80] sm:$0xf]
  %v2053 = vld [vmem:[%s1 + $0x1e84] sm:$0xf]
  %v2054 = vld [vmem:[%s1 + $0x1e88] sm:$0xf]
  %v2055 = vld [vmem:[%s1 + $0x1e8c] sm:$0xf]
  %v2056 = vld [vmem:[%s1 + $0x1e90] sm:$0xf]
  %v2057 = vld [vmem:[%s1 + $0x1e94] sm:$0xf]
  %v2058 = vld [vmem:[%s1 + $0x1e98] sm:$0xf]
  %v2059 = vld [vmem:[%s1 + $0x1e9c] sm:$0xf]
  %v2060 = vld [vmem:[%s1 + $0x1ea0] sm:$0xf]
  %v2061 = vld [vmem:[%s1 + $0x1ea4] sm:$0xf]
  %v2062 = vld [vmem:[%s1 + $0x1ea8] sm:$0xf]
  %v2063 = vld [vmem:[%s1 + $0x1eac] sm:$0xf]
  %v2064 = vld [vmem:[%s1 + $0x1eb0] sm:$0xf]
  %v2065 = vld [vmem:[%s1 + $0x1eb4] sm:$0xf]
  %v2066 = vld [vmem:[%s1 + $0x1eb8] sm:$0xf]
  %v2067 = vld [vmem:[%s1 + $0x1ebc] sm:$0xf]
  %v2068 = vld [vmem:[%s1 + $0x1ec0] sm:$0xf]
  %v2069 = vld [vmem:[%s1 + $0x1ec4] sm:$0xf]
  %v2070 = vld [vmem:[%s1 + $0x1ec8] sm:$0xf]
  %v2071 = vld [vmem:[%s1 + $0x1ecc] sm:$0xf]
  %v2072 = vld [vmem:[%s1 + $0x1ed0] sm:$0xf]
  %v2073 = vld [vmem:[%s1 + $0x1ed4] sm:$0xf]
  %v2074 = vld [vmem:[%s1 + $0x1ed8] sm:$0xf]
  %v2075 = vld [vmem:[%s1 + $0x1edc] sm:$0xf]
  %v2076 = vld [vmem:[%s1 + $0x1ee0] sm:$0xf]
  %v2077 = vld [vmem:[%s1 + $0x1ee4] sm:$0xf]
  %v2078 = vld [vmem:[%s1 + $0x1ee8] sm:$0xf]
  %v2079 = vld [vmem:[%s1 + $0x1eec] sm:$0xf]
  %v2080 = vld [vmem:[%s1 + $0x1ef0] sm:$0xf]
  %v2081 = vld [vmem:[%s1 + $0x1ef4] sm:$0xf]
  %v2082 = vld [vmem:[%s1 + $0x1ef8] sm:$0xf]
  %v2083 = vld [vmem:[%s1 + $0x1efc] sm:$0xf]
  %v2084 = vld [vmem:[%s1 + $0x1f00] sm:$0xf]
  %v2085 = vld [vmem:[%s1 + $0x1f04] sm:$0xf]
  %v2086 = vld [vmem:[%s1 + $0x1f08] sm:$0xf]
  %v2087 = vld [vmem:[%s1 + $0x1f0c] sm:$0xf]
  %v2088 = vld [vmem:[%s1 + $0x1f10] sm:$0xf]
  %v2089 = vld [vmem:[%s1 + $0x1f14] sm:$0xf]
  %v2090 = vld [vmem:[%s1 + $0x1f18] sm:$0xf]
  %v2091 = vld [vmem:[%s1 + $0x1f1c] sm:$0xf]
  %v2092 = vld [vmem:[%s1 + $0x1f20] sm:$0xf]
  %v2093 = vld [vmem:[%s1 + $0x1f24] sm:$0xf]
  %v2094 = vld [vmem:[%s1 + $0x1f28] sm:$0xf]
  %v2095 = vld [vmem:[%s1 + $0x1f2c] sm:$0xf]
  %v2096 = vld [vmem:[%s1 + $0x1f30] sm:$0xf]
  %v2097 = vld [vmem:[%s1 + $0x1f34] sm:$0xf]
  %v2098 = vld [vmem:[%s1 + $0x1f38] sm:$0xf]
  %v2099 = vld [vmem:[%s1 + $0x1f3c] sm:$0xf]
  %v2100 = vld [vmem:[%s1 + $0x1f40] sm:$0xf]
  %v2101 = vld [vmem:[%s1 + $0x1f44] sm:$0xf]
  %v2102 = vld [vmem:[%s1 + $0x1f48] sm:$0xf]
  %v2103 = vld [vmem:[%s1 + $0x1f4c] sm:$0xf]
  %v2104 = vld [vmem:[%s1 + $0x1f50] sm:$0xf]
  %v2105 = vld [vmem:[%s1 + $0x1f54] sm:$0xf]
  %v2106 = vld [vmem:[%s1 + $0x1f58] sm:$0xf]
  %v2107 = vld [vmem:[%s1 + $0x1f5c] sm:$0xf]
  %v2108 = vld [vmem:[%s1 + $0x1f60] sm:$0xf]
  %v2109 = vld [vmem:[%s1 + $0x1f64] sm:$0xf]
  %v2110 = vld [vmem:[%s1 + $0x1f68] sm:$0xf]
  %v2111 = vld [vmem:[%s1 + $0x1f6c] sm:$0xf]
  %v2112 = vld [vmem:[%s1 + $0x1f70] sm:$0xf]
  %v2113 = vld [vmem:[%s1 + $0x1f74] sm:$0xf]
  %v2114 = vld [vmem:[%s1 + $0x1f78] sm:$0xf]
  %v2115 = vld [vmem:[%s1 + $0x1f7c] sm:$0xf]
  %v2116 = vld [vmem:[%s1 + $0x1f80] sm:$0xf]
  %v2117 = vld [vmem:[%s1 + $0x1f84] sm:$0xf]
  %v2118 = vld [vmem:[%s1 + $0x1f88] sm:$0xf]
  %v2119 = vld [vmem:[%s1 + $0x1f8c] sm:$0xf]
  %v2120 = vld [vmem:[%s1 + $0x1f90] sm:$0xf]
  %v2121 = vld [vmem:[%s1 + $0x1f94] sm:$0xf]
  %v2122 = vld [vmem:[%s1 + $0x1f98] sm:$0xf]
  %v2123 = vld [vmem:[%s1 + $0x1f9c] sm:$0xf]
  %v2124 = vld [vmem:[%s1 + $0x1fa0] sm:$0xf]
  %v2125 = vld [vmem:[%s1 + $0x1fa4] sm:$0xf]
  %v2126 = vld [vmem:[%s1 + $0x1fa8] sm:$0xf]
  %v2127 = vld [vmem:[%s1 + $0x1fac] sm:$0xf]
  %v2128 = vld [vmem:[%s1 + $0x1fb0] sm:$0xf]
  %v2129 = vld [vmem:[%s1 + $0x1fb4] sm:$0xf]
  %v2130 = vld [vmem:[%s1 + $0x1fb8] sm:$0xf]
  %v2131 = vld [vmem:[%s1 + $0x1fbc] sm:$0xf]
  %v2132 = vld [vmem:[%s1 + $0x1fc0] sm:$0xf]
  %v2133 = vld [vmem:[%s1 + $0x1fc4] sm:$0xf]
  %v2134 = vld [vmem:[%s1 + $0x1fc8] sm:$0xf]
  %v2135 = vld [vmem:[%s1 + $0x1fcc] sm:$0xf]
  %v2136 = vld [vmem:[%s1 + $0x1fd0] sm:$0xf]
  %v2137 = vld [vmem:[%s1 + $0x1fd4] sm:$0xf]
  %v2138 = vld [vmem:[%s1 + $0x1fd8] sm:$0xf]
  %v2139 = vld [vmem:[%s1 + $0x1fdc] sm:$0xf]
  %v2140 = vld [vmem:[%s1 + $0x1fe0] sm:$0xf]
  %v2141 = vld [vmem:[%s1 + $0x1fe4] sm:$0xf]
  %v2142 = vld [vmem:[%s1 + $0x1fe8] sm:$0xf]
  %v2143 = vld [vmem:[%s1 + $0x1fec] sm:$0xf]
  %v2144 = vld [vmem:[%s1 + $0x1ff0] sm:$0xf]
  %v2145 = vld [vmem:[%s1 + $0x1ff4] sm:$0xf]
  %v2146 = vld [vmem:[%s1 + $0x1ff8] sm:$0xf]
  %v2147 = vld [vmem:[%s1 + $0x1ffc] sm:$0xf]
  %v2148 = vld [vmem:[%s1 + $0x2000] sm:$0xf]
  %v2149 = vld [vmem:[%s1 + $0x2004] sm:$0xf]
  %v2150 = vld [vmem:[%s1 + $0x2008] sm:$0xf]
  %v2151 = vld [vmem:[%s1 + $0x200c] sm:$0xf]
  %v2152 = vld [vmem:[%s1 + $0x2010] sm:$0xf]
  %v2153 = vld [vmem:[%s1 + $0x2014] sm:$0xf]
  %v2154 = vld [vmem:[%s1 + $0x2018] sm:$0xf]
  %v2155 = vld [vmem:[%s1 + $0x201c] sm:$0xf]
  %v2156 = vld [vmem:[%s1 + $0x2020] sm:$0xf]
  %v2157 = vld [vmem:[%s1 + $0x2024] sm:$0xf]
  %v2158 = vld [vmem:[%s1 + $0x2028] sm:$0xf]
  %v2159 = vld [vmem:[%s1 + $0x202c] sm:$0xf]
  %v2160 = vld [vmem:[%s1 + $0x2030] sm:$0xf]
  %v2161 = vld [vmem:[%s1 + $0x2034] sm:$0xf]
  %v2162 = vld [vmem:[%s1 + $0x2038] sm:$0xf]
  %v2163 = vld [vmem:[%s1 + $0x203c] sm:$0xf]
  %v2164 = vld [vmem:[%s1 + $0x2040] sm:$0xf]
  %v2165 = vld [vmem:[%s1 + $0x2044] sm:$0xf]
  %v2166 = vld [vmem:[%s1 + $0x2048] sm:$0xf]
  %v2167 = vld [vmem:[%s1 + $0x204c] sm:$0xf]
  %v2168 = vld [vmem:[%s1 + $0x2050] sm:$0xf]
  %v2169 = vld [vmem:[%s1 + $0x2054] sm:$0xf]
  %v2170 = vld [vmem:[%s1 + $0x2058] sm:$0xf]
  %v2171 = vld [vmem:[%s1 + $0x205c] sm:$0xf]
  %v2172 = vld [vmem:[%s1 + $0x2060] sm:$0xf]
  %v2173 = vld [vmem:[%s1 + $0x2064] sm:$0xf]
  %v2174 = vld [vmem:[%s1 + $0x2068] sm:$0xf]
  %v2175 = vld [vmem:[%s1 + $0x206c] sm:$0xf]
  %v2176 = vld [vmem:[%s1 + $0x2070] sm:$0xf]
  %v2177 = vld [vmem:[%s1 + $0x2074] sm:$0xf]
  %v2178 = vld [vmem:[%s1 + $0x2078] sm:$0xf]
  %v2179 = vld [vmem:[%s1 + $0x207c] sm:$0xf]
  %v2180 = vld [vmem:[%s1 + $0x2080] sm:$0xf]
  %v2181 = vld [vmem:[%s1 + $0x2084] sm:$0xf]
  %v2182 = vld [vmem:[%s1 + $0x2088] sm:$0xf]
  %v2183 = vld [vmem:[%s1 + $0x208c] sm:$0xf]
  %v2184 = vld [vmem:[%s1 + $0x2090] sm:$0xf]
  %v2185 = vld [vmem:[%s1 + $0x2094] sm:$0xf]
  %v2186 = vld [vmem:[%s1 + $0x2098] sm:$0xf]
  %v2187 = vld [vmem:[%s1 + $0x209c] sm:$0xf]
  %v2188 = vld [vmem:[%s1 + $0x20a0] sm:$0xf]
  %v2189 = vld [vmem:[%s1 + $0x20a4] sm:$0xf]
  %v2190 = vld [vmem:[%s1 + $0x20a8] sm:$0xf]
  %v2191 = vld [vmem:[%s1 + $0x20ac] sm:$0xf]
  %v2192 = vld [vmem:[%s1 + $0x20b0] sm:$0xf]
  %v2193 = vld [vmem:[%s1 + $0x20b4] sm:$0xf]
  %v2194 = vld [vmem:[%s1 + $0x20b8] sm:$0xf]
  %v2195 = vld [vmem:[%s1 + $0x20bc] sm:$0xf]
  %v2196 = vld [vmem:[%s1 + $0x20c0] sm:$0xf]
  %v2197 = vld [vmem:[%s1 + $0x20c4] sm:$0xf]
  %v2198 = vld [vmem:[%s1 + $0x20c8] sm:$0xf]
  %v2199 = vld [vmem:[%s1 + $0x20cc] sm:$0xf]
  %v2200 = vld [vmem:[%s1 + $0x20d0] sm:$0xf]
  %v2201 = vld [vmem:[%s1 + $0x20d4] sm:$0xf]
  %v2202 = vld [vmem:[%s1 + $0x20d8] sm:$0xf]
  %v2203 = vld [vmem:[%s1 + $0x20dc] sm:$0xf]
  %v2204 = vld [vmem:[%s1 + $0x20e0] sm:$0xf]
  %v2205 = vld [vmem:[%s1 + $0x20e4] sm:$0xf]
  %v2206 = vld [vmem:[%s1 + $0x20e8] sm:$0xf]
  %v2207 = vld [vmem:[%s1 + $0x20ec] sm:$0xf]
  %v2208 = vld [vmem:[%s1 + $0x20f0] sm:$0xf]
  %v2209 = vld [vmem:[%s1 + $0x20f4] sm:$0xf]
  %v2210 = vld [vmem:[%s1 + $0x20f8] sm:$0xf]
  %v2211 = vld [vmem:[%s1 + $0x20fc] sm:$0xf]
  %v2212 = vld [vmem:[%s1 + $0x2100] sm:$0xf]
  %v2213 = vld [vmem:[%s1 + $0x2104] sm:$0xf]
  %v2214 = vld [vmem:[%s1 + $0x2108] sm:$0xf]
  %v2215 = vld [vmem:[%s1 + $0x210c] sm:$0xf]
  %v2216 = vld [vmem:[%s1 + $0x2110] sm:$0xf]
  %v2217 = vld [vmem:[%s1 + $0x2114] sm:$0xf]
  %v2218 = vld [vmem:[%s1 + $0x2118] sm:$0xf]
  %v2219 = vld [vmem:[%s1 + $0x211c] sm:$0xf]
  %v2220 = vld [vmem:[%s1 + $0x2120] sm:$0xf]
  %v2221 = vld [vmem:[%s1 + $0x2124] sm:$0xf]
  %v2222 = vld [vmem:[%s1 + $0x2128] sm:$0xf]
  %v2223 = vld [vmem:[%s1 + $0x212c] sm:$0xf]
  %v2224 = vld [vmem:[%s1 + $0x2130] sm:$0xf]
  %v2225 = vld [vmem:[%s1 + $0x2134] sm:$0xf]
  %v2226 = vld [vmem:[%s1 + $0x2138] sm:$0xf]
  %v2227 = vld [vmem:[%s1 + $0x213c] sm:$0xf]
  %v2228 = vld [vmem:[%s1 + $0x2140] sm:$0xf]
  %v2229 = vld [vmem:[%s1 + $0x2144] sm:$0xf]
  %v2230 = vld [vmem:[%s1 + $0x2148] sm:$0xf]
  %v2231 = vld [vmem:[%s1 + $0x214c] sm:$0xf]
  %v2232 = vld [vmem:[%s1 + $0x2150] sm:$0xf]
  %v2233 = vld [vmem:[%s1 + $0x2154] sm:$0xf]
  %v2234 = vld [vmem:[%s1 + $0x2158] sm:$0xf]
  %v2235 = vld [vmem:[%s1 + $0x215c] sm:$0xf]
  %v2236 = vld [vmem:[%s1 + $0x2160] sm:$0xf]
  %v2237 = vld [vmem:[%s1 + $0x2164] sm:$0xf]
  %v2238 = vld [vmem:[%s1 + $0x2168] sm:$0xf]
  %v2239 = vld [vmem:[%s1 + $0x216c] sm:$0xf]
  %v2240 = vld [vmem:[%s1 + $0x2170] sm:$0xf]
  %v2241 = vld [vmem:[%s1 + $0x2174] sm:$0xf]
  %v2242 = vld [vmem:[%s1 + $0x2178] sm:$0xf]
  %v2243 = vld [vmem:[%s1 + $0x217c] sm:$0xf]
  %v2244 = vld [vmem:[%s1 + $0x2180] sm:$0xf]
  %v2245 = vld [vmem:[%s1 + $0x2184] sm:$0xf]
  %v2246 = vld [vmem:[%s1 + $0x2188] sm:$0xf]
  %v2247 = vld [vmem:[%s1 + $0x218c] sm:$0xf]
  %v2248 = vld [vmem:[%s1 + $0x2190] sm:$0xf]
  %v2249 = vld [vmem:[%s1 + $0x2194] sm:$0xf]
  %v2250 = vld [vmem:[%s1 + $0x2198] sm:$0xf]
  %v2251 = vld [vmem:[%s1 + $0x219c] sm:$0xf]
  %v2252 = vld [vmem:[%s1 + $0x21a0] sm:$0xf]
  %v2253 = vld [vmem:[%s1 + $0x21a4] sm:$0xf]
  %v2254 = vld [vmem:[%s1 + $0x21a8] sm:$0xf]
  %v2255 = vld [vmem:[%s1 + $0x21ac] sm:$0xf]
  %v2256 = vld [vmem:[%s1 + $0x21b0] sm:$0xf]
  %v2257 = vld [vmem:[%s1 + $0x21b4] sm:$0xf]
  %v2258 = vld [vmem:[%s1 + $0x21b8] sm:$0xf]
  %v2259 = vld [vmem:[%s1 + $0x21bc] sm:$0xf]
  %v2260 = vld [vmem:[%s1 + $0x21c0] sm:$0xf]
  %v2261 = vld [vmem:[%s1 + $0x21c4] sm:$0xf]
  %v2262 = vld [vmem:[%s1 + $0x21c8] sm:$0xf]
  %v2263 = vld [vmem:[%s1 + $0x21cc] sm:$0xf]
  %v2264 = vld [vmem:[%s1 + $0x21d0] sm:$0xf]
  %v2265 = vld [vmem:[%s1 + $0x21d4] sm:$0xf]
  %v2266 = vld [vmem:[%s1 + $0x21d8] sm:$0xf]
  %v2267 = vld [vmem:[%s1 + $0x21dc] sm:$0xf]
  %v2268 = vld [vmem:[%s1 + $0x21e0] sm:$0xf]
  %v2269 = vld [vmem:[%s1 + $0x21e4] sm:$0xf]
  %v2270 = vld [vmem:[%s1 + $0x21e8] sm:$0xf]
  %v2271 = vld [vmem:[%s1 + $0x21ec] sm:$0xf]
  %v2272 = vld [vmem:[%s1 + $0x21f0] sm:$0xf]
  %v2273 = vld [vmem:[%s1 + $0x21f4] sm:$0xf]
  %v2274 = vld [vmem:[%s1 + $0x21f8] sm:$0xf]
  %v2275 = vld [vmem:[%s1 + $0x21fc] sm:$0xf]
  %v2276 = vld [vmem:[%s1 + $0x2200] sm:$0xf]
  %v2277 = vld [vmem:[%s1 + $0x2204] sm:$0xf]
  %v2278 = vld [vmem:[%s1 + $0x2208] sm:$0xf]
  %v2279 = vld [vmem:[%s1 + $0x220c] sm:$0xf]
  %v2280 = vld [vmem:[%s1 + $0x2210] sm:$0xf]
  %v2281 = vld [vmem:[%s1 + $0x2214] sm:$0xf]
  %v2282 = vld [vmem:[%s1 + $0x2218] sm:$0xf]
  %v2283 = vld [vmem:[%s1 + $0x221c] sm:$0xf]
  %v2284 = vld [vmem:[%s1 + $0x2220] sm:$0xf]
  %v2285 = vld [vmem:[%s1 + $0x2224] sm:$0xf]
  %v2286 = vld [vmem:[%s1 + $0x2228] sm:$0xf]
  %v2287 = vld [vmem:[%s1 + $0x222c] sm:$0xf]
  %v2288 = vld [vmem:[%s1 + $0x2230] sm:$0xf]
  %v2289 = vld [vmem:[%s1 + $0x2234] sm:$0xf]
  %v2290 = vld [vmem:[%s1 + $0x2238] sm:$0xf]
  %v2291 = vld [vmem:[%s1 + $0x223c] sm:$0xf]
  %v2292 = vld [vmem:[%s1 + $0x2240] sm:$0xf]
  %v2293 = vld [vmem:[%s1 + $0x2244] sm:$0xf]
  %v2294 = vld [vmem:[%s1 + $0x2248] sm:$0xf]
  %v2295 = vld [vmem:[%s1 + $0x224c] sm:$0xf]
  %v2296 = vld [vmem:[%s1 + $0x2250] sm:$0xf]
  %v2297 = vld [vmem:[%s1 + $0x2254] sm:$0xf]
  %v2298 = vld [vmem:[%s1 + $0x2258] sm:$0xf]
  %v2299 = vld [vmem:[%s1 + $0x225c] sm:$0xf]
  %v2300 = vld [vmem:[%s1 + $0x2260] sm:$0xf]
  %v2301 = vld [vmem:[%s1 + $0x2264] sm:$0xf]
  %v2302 = vld [vmem:[%s1 + $0x2268] sm:$0xf]
  %v2303 = vld [vmem:[%s1 + $0x226c] sm:$0xf]
  %v2304 = vld [vmem:[%s1 + $0x2270] sm:$0xf]
  %v2305 = vld [vmem:[%s1 + $0x2274] sm:$0xf]
  %v2306 = vld [vmem:[%s1 + $0x2278] sm:$0xf]
  %v2307 = vld [vmem:[%s1 + $0x227c] sm:$0xf]
  %v2308 = vld [vmem:[%s1 + $0x2280] sm:$0xf]
  %v2309 = vld [vmem:[%s1 + $0x2284] sm:$0xf]
  %v2310 = vld [vmem:[%s1 + $0x2288] sm:$0xf]
  %v2311 = vld [vmem:[%s1 + $0x228c] sm:$0xf]
  %v2312 = vld [vmem:[%s1 + $0x2290] sm:$0xf]
  %v2313 = vld [vmem:[%s1 + $0x2294] sm:$0xf]
  %v2314 = vld [vmem:[%s1 + $0x2298] sm:$0xf]
  %v2315 = vld [vmem:[%s1 + $0x229c] sm:$0xf]
  %v2316 = vld [vmem:[%s1 + $0x22a0] sm:$0xf]
  %v2317 = vld [vmem:[%s1 + $0x22a4] sm:$0xf]
  %v2318 = vld [vmem:[%s1 + $0x22a8] sm:$0xf]
  %v2319 = vld [vmem:[%s1 + $0x22ac] sm:$0xf]
  %v2320 = vld [vmem:[%s1 + $0x22b0] sm:$0xf]
  %v2321 = vld [vmem:[%s1 + $0x22b4] sm:$0xf]
  %v2322 = vld [vmem:[%s1 + $0x22b8] sm:$0xf]
  %v2323 = vld [vmem:[%s1 + $0x22bc] sm:$0xf]
  %v2324 = vld [vmem:[%s1 + $0x22c0] sm:$0xf]
  %v2325 = vld [vmem:[%s1 + $0x22c4] sm:$0xf]
  %v2326 = vld [vmem:[%s1 + $0x22c8] sm:$0xf]
  %v2327 = vld [vmem:[%s1 + $0x22cc] sm:$0xf]
  %v2328 = vld [vmem:[%s1 + $0x22d0] sm:$0xf]
  %v2329 = vld [vmem:[%s1 + $0x22d4] sm:$0xf]
  %v2330 = vld [vmem:[%s1 + $0x22d8] sm:$0xf]
  %v2331 = vld [vmem:[%s1 + $0x22dc] sm:$0xf]
  %v2332 = vld [vmem:[%s1 + $0x22e0] sm:$0xf]
  %v2333 = vld [vmem:[%s1 + $0x22e4] sm:$0xf]
  %v2334 = vld [vmem:[%s1 + $0x22e8] sm:$0xf]
  %v2335 = vld [vmem:[%s1 + $0x22ec] sm:$0xf]
  %v2336 = vld [vmem:[%s1 + $0x22f0] sm:$0xf]
  %v2337 = vld [vmem:[%s1 + $0x22f4] sm:$0xf]
  %v2338 = vld [vmem:[%s1 + $0x22f8] sm:$0xf]
  %v2339 = vld [vmem:[%s1 + $0x22fc] sm:$0xf]
  %v2340 = vld [vmem:[%s1 + $0x2300] sm:$0xf]
  %v2341 = vld [vmem:[%s1 + $0x2304] sm:$0xf]
  %v2342 = vld [vmem:[%s1 + $0x2308] sm:$0xf]
  %v2343 = vld [vmem:[%s1 + $0x230c] sm:$0xf]
  %v2344 = vld [vmem:[%s1 + $0x2310] sm:$0xf]
  %v2345 = vld [vmem:[%s1 + $0x2314] sm:$0xf]
  %v2346 = vld [vmem:[%s1 + $0x2318] sm:$0xf]
  %v2347 = vld [vmem:[%s1 + $0x231c] sm:$0xf]
  %v2348 = vld [vmem:[%s1 + $0x2320] sm:$0xf]
  %v2349 = vld [vmem:[%s1 + $0x2324] sm:$0xf]
  %v2350 = vld [vmem:[%s1 + $0x2328] sm:$0xf]
  %v2351 = vld [vmem:[%s1 + $0x232c] sm:$0xf]
  %v2352 = vld [vmem:[%s1 + $0x2330] sm:$0xf]
  %v2353 = vld [vmem:[%s1 + $0x2334] sm:$0xf]
  %v2354 = vld [vmem:[%s1 + $0x2338] sm:$0xf]
  %v2355 = vld [vmem:[%s1 + $0x233c] sm:$0xf]
  %v2356 = vld [vmem:[%s1 + $0x2340] sm:$0xf]
  %v2357 = vld [vmem:[%s1 + $0x2344] sm:$0xf]
  %v2358 = vld [vmem:[%s1 + $0x2348] sm:$0xf]
  %v2359 = vld [vmem:[%s1 + $0x234c] sm:$0xf]
  %v2360 = vld [vmem:[%s1 + $0x2350] sm:$0xf]
  %v2361 = vld [vmem:[%s1 + $0x2354] sm:$0xf]
  %v2362 = vld [vmem:[%s1 + $0x2358] sm:$0xf]
  %v2363 = vld [vmem:[%s1 + $0x235c] sm:$0xf]
  %v2364 = vld [vmem:[%s1 + $0x2360] sm:$0xf]
  %v2365 = vld [vmem:[%s1 + $0x2364] sm:$0xf]
  %v2366 = vld [vmem:[%s1 + $0x2368] sm:$0xf]
  %v2367 = vld [vmem:[%s1 + $0x236c] sm:$0xf]
  %v2368 = vld [vmem:[%s1 + $0x2370] sm:$0xf]
  %v2369 = vld [vmem:[%s1 + $0x2374] sm:$0xf]
  %v2370 = vld [vmem:[%s1 + $0x2378] sm:$0xf]
  %v2371 = vld [vmem:[%s1 + $0x237c] sm:$0xf]
  %v2372 = vld [vmem:[%s1 + $0x2380] sm:$0xf]
  %v2373 = vld [vmem:[%s1 + $0x2384] sm:$0xf]
  %v2374 = vld [vmem:[%s1 + $0x2388] sm:$0xf]
  %v2375 = vld [vmem:[%s1 + $0x238c] sm:$0xf]
  %v2376 = vld [vmem:[%s1 + $0x2390] sm:$0xf]
  %v2377 = vld [vmem:[%s1 + $0x2394] sm:$0xf]
  %v2378 = vld [vmem:[%s1 + $0x2398] sm:$0xf]
  %v2379 = vld [vmem:[%s1 + $0x239c] sm:$0xf]
  %v2380 = vld [vmem:[%s1 + $0x23a0] sm:$0xf]
  %v2381 = vld [vmem:[%s1 + $0x23a4] sm:$0xf]
  %v2382 = vld [vmem:[%s1 + $0x23a8] sm:$0xf]
  %v2383 = vld [vmem:[%s1 + $0x23ac] sm:$0xf]
  %v2384 = vld [vmem:[%s1 + $0x23b0] sm:$0xf]
  %v2385 = vld [vmem:[%s1 + $0x23b4] sm:$0xf]
  %v2386 = vld [vmem:[%s1 + $0x23b8] sm:$0xf]
  %v2387 = vld [vmem:[%s1 + $0x23bc] sm:$0xf]
  %v2388 = vld [vmem:[%s1 + $0x23c0] sm:$0xf]
  %v2389 = vld [vmem:[%s1 + $0x23c4] sm:$0xf]
  %v2390 = vld [vmem:[%s1 + $0x23c8] sm:$0xf]
  %v2391 = vld [vmem:[%s1 + $0x23cc] sm:$0xf]
  %v2392 = vld [vmem:[%s1 + $0x23d0] sm:$0xf]
  %v2393 = vld [vmem:[%s1 + $0x23d4] sm:$0xf]
  %v2394 = vld [vmem:[%s1 + $0x23d8] sm:$0xf]
  %v2395 = vld [vmem:[%s1 + $0x23dc] sm:$0xf]
  %v2396 = vld [vmem:[%s1 + $0x23e0] sm:$0xf]
  %v2397 = vld [vmem:[%s1 + $0x23e4] sm:$0xf]
  %v2398 = vld [vmem:[%s1 + $0x23e8] sm:$0xf]
  %v2399 = vld [vmem:[%s1 + $0x23ec] sm:$0xf]
  %v2400 = vld [vmem:[%s1 + $0x23f0] sm:$0xf]
  %v2401 = vld [vmem:[%s1 + $0x23f4] sm:$0xf]
  %v2402 = vld [vmem:[%s1 + $0x23f8] sm:$0xf]
  %v2403 = vld [vmem:[%s1 + $0x23fc] sm:$0xf]
  %v2404 = vld [vmem:[%s1 + $0x2400] sm:$0xf]
  %v2405 = vld [vmem:[%s1 + $0x2404] sm:$0xf]
  %v2406 = vld [vmem:[%s1 + $0x2408] sm:$0xf]
  %v2407 = vld [vmem:[%s1 + $0x240c] sm:$0xf]
  %v2408 = vld [vmem:[%s1 + $0x2410] sm:$0xf]
  %v2409 = vld [vmem:[%s1 + $0x2414] sm:$0xf]
  %v2410 = vld [vmem:[%s1 + $0x2418] sm:$0xf]
  %v2411 = vld [vmem:[%s1 + $0x241c] sm:$0xf]
  %v2412 = vld [vmem:[%s1 + $0x2420] sm:$0xf]
  %v2413 = vld [vmem:[%s1 + $0x2424] sm:$0xf]
  %v2414 = vld [vmem:[%s1 + $0x2428] sm:$0xf]
  %v2415 = vld [vmem:[%s1 + $0x242c] sm:$0xf]
  %v2416 = vld [vmem:[%s1 + $0x2430] sm:$0xf]
  %v2417 = vld [vmem:[%s1 + $0x2434] sm:$0xf]
  %v2418 = vld [vmem:[%s1 + $0x2438] sm:$0xf]
  %v2419 = vld [vmem:[%s1 + $0x243c] sm:$0xf]
  %v2420 = vld [vmem:[%s1 + $0x2440] sm:$0xf]
  %v2421 = vld [vmem:[%s1 + $0x2444] sm:$0xf]
  %v2422 = vld [vmem:[%s1 + $0x2448] sm:$0xf]
  %v2423 = vld [vmem:[%s1 + $0x244c] sm:$0xf]
  %v2424 = vld [vmem:[%s1 + $0x2450] sm:$0xf]
  %v2425 = vld [vmem:[%s1 + $0x2454] sm:$0xf]
  %v2426 = vld [vmem:[%s1 + $0x2458] sm:$0xf]
  %v2427 = vld [vmem:[%s1 + $0x245c] sm:$0xf]
  %v2428 = vld [vmem:[%s1 + $0x2460] sm:$0xf]
  %v2429 = vld [vmem:[%s1 + $0x2464] sm:$0xf]
  %v2430 = vld [vmem:[%s1 + $0x2468] sm:$0xf]
  %v2431 = vld [vmem:[%s1 + $0x246c] sm:$0xf]
  %v2432 = vld [vmem:[%s1 + $0x2470] sm:$0xf]
  %v2433 = vld [vmem:[%s1 + $0x2474] sm:$0xf]
  %v2434 = vld [vmem:[%s1 + $0x2478] sm:$0xf]
  %v2435 = vld [vmem:[%s1 + $0x247c] sm:$0xf]
  %v2436 = vld [vmem:[%s1 + $0x2480] sm:$0xf]
  %v2437 = vld [vmem:[%s1 + $0x2484] sm:$0xf]
  %v2438 = vld [vmem:[%s1 + $0x2488] sm:$0xf]
  %v2439 = vld [vmem:[%s1 + $0x248c] sm:$0xf]
  %v2440 = vld [vmem:[%s1 + $0x2490] sm:$0xf]
  %v2441 = vld [vmem:[%s1 + $0x2494] sm:$0xf]
  %v2442 = vld [vmem:[%s1 + $0x2498] sm:$0xf]
  %v2443 = vld [vmem:[%s1 + $0x249c] sm:$0xf]
  %v2444 = vld [vmem:[%s1 + $0x24a0] sm:$0xf]
  %v2445 = vld [vmem:[%s1 + $0x24a4] sm:$0xf]
  %v2446 = vld [vmem:[%s1 + $0x24a8] sm:$0xf]
  %v2447 = vld [vmem:[%s1 + $0x24ac] sm:$0xf]
  %v2448 = vld [vmem:[%s1 + $0x24b0] sm:$0xf]
  %v2449 = vld [vmem:[%s1 + $0x24b4] sm:$0xf]
  %v2450 = vld [vmem:[%s1 + $0x24b8] sm:$0xf]
  %v2451 = vld [vmem:[%s1 + $0x24bc] sm:$0xf]
  %v2452 = vld [vmem:[%s1 + $0x24c0] sm:$0xf]
  %v2453 = vld [vmem:[%s1 + $0x24c4] sm:$0xf]
  %v2454 = vld [vmem:[%s1 + $0x24c8] sm:$0xf]
  %v2455 = vld [vmem:[%s1 + $0x24cc] sm:$0xf]
  %v2456 = vld [vmem:[%s1 + $0x24d0] sm:$0xf]
  %v2457 = vld [vmem:[%s1 + $0x24d4] sm:$0xf]
  %v2458 = vld [vmem:[%s1 + $0x24d8] sm:$0xf]
  %v2459 = vld [vmem:[%s1 + $0x24dc] sm:$0xf]
  %v2460 = vld [vmem:[%s1 + $0x24e0] sm:$0xf]
  %v2461 = vld [vmem:[%s1 + $0x24e4] sm:$0xf]
  %v2462 = vld [vmem:[%s1 + $0x24e8] sm:$0xf]
  %v2463 = vld [vmem:[%s1 + $0x24ec] sm:$0xf]
  %v2464 = vld [vmem:[%s1 + $0x24f0] sm:$0xf]
  %v2465 = vld [vmem:[%s1 + $0x24f4] sm:$0xf]
  %v2466 = vld [vmem:[%s1 + $0x24f8] sm:$0xf]
  %v2467 = vld [vmem:[%s1 + $0x24fc] sm:$0xf]
  %v2468 = vld [vmem:[%s1 + $0x2500] sm:$0xf]
  %v2469 = vld [vmem:[%s1 + $0x2504] sm:$0xf]
  %v2470 = vld [vmem:[%s1 + $0x2508] sm:$0xf]
  %v2471 = vld [vmem:[%s1 + $0x250c] sm:$0xf]
  %v2472 = vld [vmem:[%s1 + $0x2510] sm:$0xf]
  %v2473 = vld [vmem:[%s1 + $0x2514] sm:$0xf]
  %v2474 = vld [vmem:[%s1 + $0x2518] sm:$0xf]
  %v2475 = vld [vmem:[%s1 + $0x251c] sm:$0xf]
  %v2476 = vld [vmem:[%s1 + $0x2520] sm:$0xf]
  %v2477 = vld [vmem:[%s1 + $0x2524] sm:$0xf]
  %v2478 = vld [vmem:[%s1 + $0x2528] sm:$0xf]
  %v2479 = vld [vmem:[%s1 + $0x252c] sm:$0xf]
  %v2480 = vld [vmem:[%s1 + $0x2530] sm:$0xf]
  %v2481 = vld [vmem:[%s1 + $0x2534] sm:$0xf]
  %v2482 = vld [vmem:[%s1 + $0x2538] sm:$0xf]
  %v2483 = vld [vmem:[%s1 + $0x253c] sm:$0xf]
  %v2484 = vld [vmem:[%s1 + $0x2540] sm:$0xf]
  %v2485 = vld [vmem:[%s1 + $0x2544] sm:$0xf]
  %v2486 = vld [vmem:[%s1 + $0x2548] sm:$0xf]
  %v2487 = vld [vmem:[%s1 + $0x254c] sm:$0xf]
  %v2488 = vld [vmem:[%s1 + $0x2550] sm:$0xf]
  %v2489 = vld [vmem:[%s1 + $0x2554] sm:$0xf]
  %v2490 = vld [vmem:[%s1 + $0x2558] sm:$0xf]
  %v2491 = vld [vmem:[%s1 + $0x255c] sm:$0xf]
  %v2492 = vld [vmem:[%s1 + $0x2560] sm:$0xf]
  %v2493 = vld [vmem:[%s1 + $0x2564] sm:$0xf]
  %v2494 = vld [vmem:[%s1 + $0x2568] sm:$0xf]
  %v2495 = vld [vmem:[%s1 + $0x256c] sm:$0xf]
  %v2496 = vld [vmem:[%s1 + $0x2570] sm:$0xf]
  %v2497 = vld [vmem:[%s1 + $0x2574] sm:$0xf]
  %v2498 = vld [vmem:[%s1 + $0x2578] sm:$0xf]
  %v2499 = vld [vmem:[%s1 + $0x257c] sm:$0xf]
  %v2500 = vld [vmem:[%s1 + $0x2580] sm:$0xf]
  %v2501 = vld [vmem:[%s1 + $0x2584] sm:$0xf]
  %v2502 = vld [vmem:[%s1 + $0x2588] sm:$0xf]
  %v2503 = vld [vmem:[%s1 + $0x258c] sm:$0xf]
  %v2504 = vld [vmem:[%s1 + $0x2590] sm:$0xf]
  %v2505 = vld [vmem:[%s1 + $0x2594] sm:$0xf]
  %v2506 = vld [vmem:[%s1 + $0x2598] sm:$0xf]
  %v2507 = vld [vmem:[%s1 + $0x259c] sm:$0xf]
  %v2508 = vld [vmem:[%s1 + $0x25a0] sm:$0xf]
  %v2509 = vld [vmem:[%s1 + $0x25a4] sm:$0xf]
  %v2510 = vld [vmem:[%s1 + $0x25a8] sm:$0xf]
  %v2511 = vld [vmem:[%s1 + $0x25ac] sm:$0xf]
  %v2512 = vld [vmem:[%s1 + $0x25b0] sm:$0xf]
  %v2513 = vld [vmem:[%s1 + $0x25b4] sm:$0xf]
  %v2514 = vld [vmem:[%s1 + $0x25b8] sm:$0xf]
  %v2515 = vld [vmem:[%s1 + $0x25bc] sm:$0xf]
  %v2516 = vld [vmem:[%s1 + $0x25c0] sm:$0xf]
  %v2517 = vld [vmem:[%s1 + $0x25c4] sm:$0xf]
  %v2518 = vld [vmem:[%s1 + $0x25c8] sm:$0xf]
  %v2519 = vld [vmem:[%s1 + $0x25cc] sm:$0xf]
  %v2520 = vld [vmem:[%s1 + $0x25d0] sm:$0xf]
  %v2521 = vld [vmem:[%s1 + $0x25d4] sm:$0xf]
  %v2522 = vld [vmem:[%s1 + $0x25d8] sm:$0xf]
  %v2523 = vld [vmem:[%s1 + $0x25dc] sm:$0xf]
  %v2524 = vld [vmem:[%s1 + $0x25e0] sm:$0xf]
  %v2525 = vld [vmem:[%s1 + $0x25e4] sm:$0xf]
  %v2526 = vld [vmem:[%s1 + $0x25e8] sm:$0xf]
  %v2527 = vld [vmem:[%s1 + $0x25ec] sm:$0xf]
  %v2528 = vld [vmem:[%s1 + $0x25f0] sm:$0xf]
  %v2529 = vld [vmem:[%s1 + $0x25f4] sm:$0xf]
  %v2530 = vld [vmem:[%s1 + $0x25f8] sm:$0xf]
  %v2531 = vld [vmem:[%s1 + $0x25fc] sm:$0xf]
  %v2532 = vld [vmem:[%s1 + $0x2600] sm:$0xf]
  %v2533 = vld [vmem:[%s1 + $0x2604] sm:$0xf]
  %v2534 = vld [vmem:[%s1 + $0x2608] sm:$0xf]
  %v2535 = vld [vmem:[%s1 + $0x260c] sm:$0xf]
  %v2536 = vld [vmem:[%s1 + $0x2610] sm:$0xf]
  %v2537 = vld [vmem:[%s1 + $0x2614] sm:$0xf]
  %v2538 = vld [vmem:[%s1 + $0x2618] sm:$0xf]
  %v2539 = vld [vmem:[%s1 + $0x261c] sm:$0xf]
  %v2540 = vld [vmem:[%s1 + $0x2620] sm:$0xf]
  %v2541 = vld [vmem:[%s1 + $0x2624] sm:$0xf]
  %v2542 = vld [vmem:[%s1 + $0x2628] sm:$0xf]
  %v2543 = vld [vmem:[%s1 + $0x262c] sm:$0xf]
  %v2544 = vld [vmem:[%s1 + $0x2630] sm:$0xf]
  %v2545 = vld [vmem:[%s1 + $0x2634] sm:$0xf]
  %v2546 = vld [vmem:[%s1 + $0x2638] sm:$0xf]
  %v2547 = vld [vmem:[%s1 + $0x263c] sm:$0xf]
  %v2548 = vld [vmem:[%s1 + $0x2640] sm:$0xf]
  %v2549 = vld [vmem:[%s1 + $0x2644] sm:$0xf]
  %v2550 = vld [vmem:[%s1 + $0x2648] sm:$0xf]
  %v2551 = vld [vmem:[%s1 + $0x264c] sm:$0xf]
  %v2552 = vld [vmem:[%s1 + $0x2650] sm:$0xf]
  %v2553 = vld [vmem:[%s1 + $0x2654] sm:$0xf]
  %v2554 = vld [vmem:[%s1 + $0x2658] sm:$0xf]
  %v2555 = vld [vmem:[%s1 + $0x265c] sm:$0xf]
  %v2556 = vld [vmem:[%s1 + $0x2660] sm:$0xf]
  %v2557 = vld [vmem:[%s1 + $0x2664] sm:$0xf]
  %v2558 = vld [vmem:[%s1 + $0x2668] sm:$0xf]
  %v2559 = vld [vmem:[%s1 + $0x266c] sm:$0xf]
  %v2560 = vld [vmem:[%s1 + $0x2670] sm:$0xf]
  %v2561 = vld [vmem:[%s1 + $0x2674] sm:$0xf]
  %v2562 = vld [vmem:[%s1 + $0x2678] sm:$0xf]
  %v2563 = vld [vmem:[%s1 + $0x267c] sm:$0xf]
  %v2564 = vld [vmem:[%s1 + $0x2680] sm:$0xf]
  %v2565 = vld [vmem:[%s1 + $0x2684] sm:$0xf]
  %v2566 = vld [vmem:[%s1 + $0x2688] sm:$0xf]
  %v2567 = vld [vmem:[%s1 + $0x268c] sm:$0xf]
  %v2568 = vld [vmem:[%s1 + $0x2690] sm:$0xf]
  %v2569 = vld [vmem:[%s1 + $0x2694] sm:$0xf]
  %v2570 = vld [vmem:[%s1 + $0x2698] sm:$0xf]
  %v2571 = vld [vmem:[%s1 + $0x269c] sm:$0xf]
  %v2572 = vld [vmem:[%s1 + $0x26a0] sm:$0xf]
  %v2573 = vld [vmem:[%s1 + $0x26a4] sm:$0xf]
  %v2574 = vld [vmem:[%s1 + $0x26a8] sm:$0xf]
  %v2575 = vld [vmem:[%s1 + $0x26ac] sm:$0xf]
  %v2576 = vld [vmem:[%s1 + $0x26b0] sm:$0xf]
  %v2577 = vld [vmem:[%s1 + $0x26b4] sm:$0xf]
  %v2578 = vld [vmem:[%s1 + $0x26b8] sm:$0xf]
  %v2579 = vld [vmem:[%s1 + $0x26bc] sm:$0xf]
  %v2580 = vld [vmem:[%s1 + $0x26c0] sm:$0xf]
  %v2581 = vld [vmem:[%s1 + $0x26c4] sm:$0xf]
  %v2582 = vld [vmem:[%s1 + $0x26c8] sm:$0xf]
  %v2583 = vld [vmem:[%s1 + $0x26cc] sm:$0xf]
  %v2584 = vld [vmem:[%s1 + $0x26d0] sm:$0xf]
  %v2585 = vld [vmem:[%s1 + $0x26d4] sm:$0xf]
  %v2586 = vld [vmem:[%s1 + $0x26d8] sm:$0xf]
  %v2587 = vld [vmem:[%s1 + $0x26dc] sm:$0xf]
  %v2588 = vld [vmem:[%s1 + $0x26e0] sm:$0xf]
  %v2589 = vld [vmem:[%s1 + $0x26e4] sm:$0xf]
  %v2590 = vld [vmem:[%s1 + $0x26e8] sm:$0xf]
  %v2591 = vld [vmem:[%s1 + $0x26ec] sm:$0xf]
  %v2592 = vld [vmem:[%s1 + $0x26f0] sm:$0xf]
  %v2593 = vld [vmem:[%s1 + $0x26f4] sm:$0xf]
  %v2594 = vld [vmem:[%s1 + $0x26f8] sm:$0xf]
  %v2595 = vld [vmem:[%s1 + $0x26fc] sm:$0xf]
  %v2596 = vld [vmem:[%s1 + $0x2700] sm:$0xf]
  %v2597 = vld [vmem:[%s1 + $0x2704] sm:$0xf]
  %v2598 = vld [vmem:[%s1 + $0x2708] sm:$0xf]
  %v2599 = vld [vmem:[%s1 + $0x270c] sm:$0xf]
  %v2600 = vld [vmem:[%s1 + $0x2710] sm:$0xf]
  %v2601 = vld [vmem:[%s1 + $0x2714] sm:$0xf]
  %v2602 = vld [vmem:[%s1 + $0x2718] sm:$0xf]
  %v2603 = vld [vmem:[%s1 + $0x271c] sm:$0xf]
  %v2604 = vld [vmem:[%s1 + $0x2720] sm:$0xf]
  %v2605 = vld [vmem:[%s1 + $0x2724] sm:$0xf]
  %v2606 = vld [vmem:[%s1 + $0x2728] sm:$0xf]
  %v2607 = vld [vmem:[%s1 + $0x272c] sm:$0xf]
  %v2608 = vld [vmem:[%s1 + $0x2730] sm:$0xf]
  %v2609 = vld [vmem:[%s1 + $0x2734] sm:$0xf]
  %v2610 = vld [vmem:[%s1 + $0x2738] sm:$0xf]
  %v2611 = vld [vmem:[%s1 + $0x273c] sm:$0xf]
  %v2612 = vld [vmem:[%s1 + $0x2740] sm:$0xf]
  %v2613 = vld [vmem:[%s1 + $0x2744] sm:$0xf]
  %v2614 = vld [vmem:[%s1 + $0x2748] sm:$0xf]
  %v2615 = vld [vmem:[%s1 + $0x274c] sm:$0xf]
  %v2616 = vld [vmem:[%s1 + $0x2750] sm:$0xf]
  %v2617 = vld [vmem:[%s1 + $0x2754] sm:$0xf]
  %v2618 = vld [vmem:[%s1 + $0x2758] sm:$0xf]
  %v2619 = vld [vmem:[%s1 + $0x275c] sm:$0xf]
  %v2620 = vld [vmem:[%s1 + $0x2760] sm:$0xf]
  %v2621 = vld [vmem:[%s1 + $0x2764] sm:$0xf]
  %v2622 = vld [vmem:[%s1 + $0x2768] sm:$0xf]
  %v2623 = vld [vmem:[%s1 + $0x276c] sm:$0xf]
  %v2624 = vld [vmem:[%s1 + $0x2770] sm:$0xf]
  %v2625 = vld [vmem:[%s1 + $0x2774] sm:$0xf]
  %v2626 = vld [vmem:[%s1 + $0x2778] sm:$0xf]
  %v2627 = vld [vmem:[%s1 + $0x277c] sm:$0xf]
  %v2628 = vld [vmem:[%s1 + $0x2780] sm:$0xf]
  %v2629 = vld [vmem:[%s1 + $0x2784] sm:$0xf]
  %v2630 = vld [vmem:[%s1 + $0x2788] sm:$0xf]
  %v2631 = vld [vmem:[%s1 + $0x278c] sm:$0xf]
  %v2632 = vld [vmem:[%s1 + $0x2790] sm:$0xf]
  %v2633 = vld [vmem:[%s1 + $0x2794] sm:$0xf]
  %v2634 = vld [vmem:[%s1 + $0x2798] sm:$0xf]
  %v2635 = vld [vmem:[%s1 + $0x279c] sm:$0xf]
  %v2636 = vld [vmem:[%s1 + $0x27a0] sm:$0xf]
  %v2637 = vld [vmem:[%s1 + $0x27a4] sm:$0xf]
  %v2638 = vld [vmem:[%s1 + $0x27a8] sm:$0xf]
  %v2639 = vld [vmem:[%s1 + $0x27ac] sm:$0xf]
  %v2640 = vld [vmem:[%s1 + $0x27b0] sm:$0xf]
  %v2641 = vld [vmem:[%s1 + $0x27b4] sm:$0xf]
  %v2642 = vld [vmem:[%s1 + $0x27b8] sm:$0xf]
  %v2643 = vld [vmem:[%s1 + $0x27bc] sm:$0xf]
  %v2644 = vld [vmem:[%s1 + $0x27c0] sm:$0xf]
  %v2645 = vld [vmem:[%s1 + $0x27c4] sm:$0xf]
  %v2646 = vld [vmem:[%s1 + $0x27c8] sm:$0xf]
  %v2647 = vld [vmem:[%s1 + $0x27cc] sm:$0xf]
  %v2648 = vld [vmem:[%s1 + $0x27d0] sm:$0xf]
  %v2649 = vld [vmem:[%s1 + $0x27d4] sm:$0xf]
  %v2650 = vld [vmem:[%s1 + $0x27d8] sm:$0xf]
  %v2651 = vld [vmem:[%s1 + $0x27dc] sm:$0xf]
  %v2652 = vld [vmem:[%s1 + $0x27e0] sm:$0xf]
  %v2653 = vld [vmem:[%s1 + $0x27e4] sm:$0xf]
  %v2654 = vld [vmem:[%s1 + $0x27e8] sm:$0xf]
  %v2655 = vld [vmem:[%s1 + $0x27ec] sm:$0xf]
  %v2656 = vld [vmem:[%s1 + $0x27f0] sm:$0xf]
  %v2657 = vld [vmem:[%s1 + $0x27f4] sm:$0xf]
  %v2658 = vld [vmem:[%s1 + $0x27f8] sm:$0xf]
  %v2659 = vld [vmem:[%s1 + $0x27fc] sm:$0xf]
  %v2660 = vld [vmem:[%s1 + $0x2800] sm:$0xf]
  %v2661 = vld [vmem:[%s1 + $0x2804] sm:$0xf]
  %v2662 = vld [vmem:[%s1 + $0x2808] sm:$0xf]
  %v2663 = vld [vmem:[%s1 + $0x280c] sm:$0xf]
  %v2664 = vld [vmem:[%s1 + $0x2810] sm:$0xf]
  %v2665 = vld [vmem:[%s1 + $0x2814] sm:$0xf]
  %v2666 = vld [vmem:[%s1 + $0x2818] sm:$0xf]
  %v2667 = vld [vmem:[%s1 + $0x281c] sm:$0xf]
  %v2668 = vld [vmem:[%s1 + $0x2820] sm:$0xf]
  %v2669 = vld [vmem:[%s1 + $0x2824] sm:$0xf]
  %v2670 = vld [vmem:[%s1 + $0x2828] sm:$0xf]
  %v2671 = vld [vmem:[%s1 + $0x282c] sm:$0xf]
  %v2672 = vld [vmem:[%s1 + $0x2830] sm:$0xf]
  %v2673 = vld [vmem:[%s1 + $0x2834] sm:$0xf]
  %v2674 = vld [vmem:[%s1 + $0x2838] sm:$0xf]
  %v2675 = vld [vmem:[%s1 + $0x283c] sm:$0xf]
  %v2676 = vld [vmem:[%s1 + $0x2840] sm:$0xf]
  %v2677 = vld [vmem:[%s1 + $0x2844] sm:$0xf]
  %v2678 = vld [vmem:[%s1 + $0x2848] sm:$0xf]
  %v2679 = vld [vmem:[%s1 + $0x284c] sm:$0xf]
  %v2680 = vld [vmem:[%s1 + $0x2850] sm:$0xf]
  %v2681 = vld [vmem:[%s1 + $0x2854] sm:$0xf]
  %v2682 = vld [vmem:[%s1 + $0x2858] sm:$0xf]
  %v2683 = vld [vmem:[%s1 + $0x285c] sm:$0xf]
  %v2684 = vld [vmem:[%s1 + $0x2860] sm:$0xf]
  %v2685 = vld [vmem:[%s1 + $0x2864] sm:$0xf]
  %v2686 = vld [vmem:[%s1 + $0x2868] sm:$0xf]
  %v2687 = vld [vmem:[%s1 + $0x286c] sm:$0xf]
  %v2688 = vld [vmem:[%s1 + $0x2870] sm:$0xf]
  %v2689 = vld [vmem:[%s1 + $0x2874] sm:$0xf]
  %v2690 = vld [vmem:[%s1 + $0x2878] sm:$0xf]
  %v2691 = vld [vmem:[%s1 + $0x287c] sm:$0xf]
  %v2692 = vld [vmem:[%s1 + $0x2880] sm:$0xf]
  %v2693 = vld [vmem:[%s1 + $0x2884] sm:$0xf]
  %v2694 = vld [vmem:[%s1 + $0x2888] sm:$0xf]
  %v2695 = vld [vmem:[%s1 + $0x288c] sm:$0xf]
  %v2696 = vld [vmem:[%s1 + $0x2890] sm:$0xf]
  %v2697 = vld [vmem:[%s1 + $0x2894] sm:$0xf]
  %v2698 = vld [vmem:[%s1 + $0x2898] sm:$0xf]
  %v2699 = vld [vmem:[%s1 + $0x289c] sm:$0xf]
  %v2700 = vld [vmem:[%s1 + $0x28a0] sm:$0xf]
  %v2701 = vld [vmem:[%s1 + $0x28a4] sm:$0xf]
  %v2702 = vld [vmem:[%s1 + $0x28a8] sm:$0xf]
  %v2703 = vld [vmem:[%s1 + $0x28ac] sm:$0xf]
  %v2704 = vld [vmem:[%s1 + $0x28b0] sm:$0xf]
  %v2705 = vld [vmem:[%s1 + $0x28b4] sm:$0xf]
  %v2706 = vld [vmem:[%s1 + $0x28b8] sm:$0xf]
  %v2707 = vld [vmem:[%s1 + $0x28bc] sm:$0xf]
  %v2708 = vld [vmem:[%s1 + $0x28c0] sm:$0xf]
  %v2709 = vld [vmem:[%s1 + $0x28c4] sm:$0xf]
  %v2710 = vld [vmem:[%s1 + $0x28c8] sm:$0xf]
  %v2711 = vld [vmem:[%s1 + $0x28cc] sm:$0xf]
  %v2712 = vld [vmem:[%s1 + $0x28d0] sm:$0xf]
  %v2713 = vld [vmem:[%s1 + $0x28d4] sm:$0xf]
  %v2714 = vld [vmem:[%s1 + $0x28d8] sm:$0xf]
  %v2715 = vld [vmem:[%s1 + $0x28dc] sm:$0xf]
  %v2716 = vld [vmem:[%s1 + $0x28e0] sm:$0xf]
  %v2717 = vld [vmem:[%s1 + $0x28e4] sm:$0xf]
  %v2718 = vld [vmem:[%s1 + $0x28e8] sm:$0xf]
  %v2719 = vld [vmem:[%s1 + $0x28ec] sm:$0xf]
  %v2720 = vld [vmem:[%s1 + $0x28f0] sm:$0xf]
  %v2721 = vld [vmem:[%s1 + $0x28f4] sm:$0xf]
  %v2722 = vld [vmem:[%s1 + $0x28f8] sm:$0xf]
  %v2723 = vld [vmem:[%s1 + $0x28fc] sm:$0xf]
  %v2724 = vld [vmem:[%s1 + $0x2900] sm:$0xf]
  %v2725 = vld [vmem:[%s1 + $0x2904] sm:$0xf]
  %v2726 = vld [vmem:[%s1 + $0x2908] sm:$0xf]
  %v2727 = vld [vmem:[%s1 + $0x290c] sm:$0xf]
  %v2728 = vld [vmem:[%s1 + $0x2910] sm:$0xf]
  %v2729 = vld [vmem:[%s1 + $0x2914] sm:$0xf]
  %v2730 = vld [vmem:[%s1 + $0x2918] sm:$0xf]
  %v2731 = vld [vmem:[%s1 + $0x291c] sm:$0xf]
  %v2732 = vld [vmem:[%s1 + $0x2920] sm:$0xf]
  %v2733 = vld [vmem:[%s1 + $0x2924] sm:$0xf]
  %v2734 = vld [vmem:[%s1 + $0x2928] sm:$0xf]
  %v2735 = vld [vmem:[%s1 + $0x292c] sm:$0xf]
  %v2736 = vld [vmem:[%s1 + $0x2930] sm:$0xf]
  %v2737 = vld [vmem:[%s1 + $0x2934] sm:$0xf]
  %v2738 = vld [vmem:[%s1 + $0x2938] sm:$0xf]
  %v2739 = vld [vmem:[%s1 + $0x293c] sm:$0xf]
  %v2740 = vld [vmem:[%s1 + $0x2940] sm:$0xf]
  %v2741 = vld [vmem:[%s1 + $0x2944] sm:$0xf]
  %v2742 = vld [vmem:[%s1 + $0x2948] sm:$0xf]
  %v2743 = vld [vmem:[%s1 + $0x294c] sm:$0xf]
  %v2744 = vld [vmem:[%s1 + $0x2950] sm:$0xf]
  %v2745 = vld [vmem:[%s1 + $0x2954] sm:$0xf]
  %v2746 = vld [vmem:[%s1 + $0x2958] sm:$0xf]
  %v2747 = vld [vmem:[%s1 + $0x295c] sm:$0xf]
  %v2748 = vld [vmem:[%s1 + $0x2960] sm:$0xf]
  %v2749 = vld [vmem:[%s1 + $0x2964] sm:$0xf]
  %v2750 = vld [vmem:[%s1 + $0x2968] sm:$0xf]
  %v2751 = vld [vmem:[%s1 + $0x296c] sm:$0xf]
  %v2752 = vld [vmem:[%s1 + $0x2970] sm:$0xf]
  %v2753 = vld [vmem:[%s1 + $0x2974] sm:$0xf]
  %v2754 = vld [vmem:[%s1 + $0x2978] sm:$0xf]
  %v2755 = vld [vmem:[%s1 + $0x297c] sm:$0xf]
  %v2756 = vld [vmem:[%s1 + $0x2980] sm:$0xf]
  %v2757 = vld [vmem:[%s1 + $0x2984] sm:$0xf]
  %v2758 = vld [vmem:[%s1 + $0x2988] sm:$0xf]
  %v2759 = vld [vmem:[%s1 + $0x298c] sm:$0xf]
  %v2760 = vld [vmem:[%s1 + $0x2990] sm:$0xf]
  %v2761 = vld [vmem:[%s1 + $0x2994] sm:$0xf]
  %v2762 = vld [vmem:[%s1 + $0x2998] sm:$0xf]
  %v2763 = vld [vmem:[%s1 + $0x299c] sm:$0xf]
  %v2764 = vld [vmem:[%s1 + $0x29a0] sm:$0xf]
  %v2765 = vld [vmem:[%s1 + $0x29a4] sm:$0xf]
  %v2766 = vld [vmem:[%s1 + $0x29a8] sm:$0xf]
  %v2767 = vld [vmem:[%s1 + $0x29ac] sm:$0xf]
  %v2768 = vld [vmem:[%s1 + $0x29b0] sm:$0xf]
  %v2769 = vld [vmem:[%s1 + $0x29b4] sm:$0xf]
  %v2770 = vld [vmem:[%s1 + $0x29b8] sm:$0xf]
  %v2771 = vld [vmem:[%s1 + $0x29bc] sm:$0xf]
  %v2772 = vld [vmem:[%s1 + $0x29c0] sm:$0xf]
  %v2773 = vld [vmem:[%s1 + $0x29c4] sm:$0xf]
  %v2774 = vld [vmem:[%s1 + $0x29c8] sm:$0xf]
  %v2775 = vld [vmem:[%s1 + $0x29cc] sm:$0xf]
  %v2776 = vld [vmem:[%s1 + $0x29d0] sm:$0xf]
  %v2777 = vld [vmem:[%s1 + $0x29d4] sm:$0xf]
  %v2778 = vld [vmem:[%s1 + $0x29d8] sm:$0xf]
  %v2779 = vld [vmem:[%s1 + $0x29dc] sm:$0xf]
  %v2780 = vld [vmem:[%s1 + $0x29e0] sm:$0xf]
  %v2781 = vld [vmem:[%s1 + $0x29e4] sm:$0xf]
  %v2782 = vld [vmem:[%s1 + $0x29e8] sm:$0xf]
  %v2783 = vld [vmem:[%s1 + $0x29ec] sm:$0xf]
  %v2784 = vld [vmem:[%s1 + $0x29f0] sm:$0xf]
  %v2785 = vld [vmem:[%s1 + $0x29f4] sm:$0xf]
  %v2786 = vld [vmem:[%s1 + $0x29f8] sm:$0xf]
  %v2787 = vld [vmem:[%s1 + $0x29fc] sm:$0xf]
  %v2788 = vld [vmem:[%s1 + $0x2a00] sm:$0xf]
  %v2789 = vld [vmem:[%s1 + $0x2a04] sm:$0xf]
  %v2790 = vld [vmem:[%s1 + $0x2a08] sm:$0xf]
  %v2791 = vld [vmem:[%s1 + $0x2a0c] sm:$0xf]
  %v2792 = vld [vmem:[%s1 + $0x2a10] sm:$0xf]
  %v2793 = vld [vmem:[%s1 + $0x2a14] sm:$0xf]
  %v2794 = vld [vmem:[%s1 + $0x2a18] sm:$0xf]
  %v2795 = vld [vmem:[%s1 + $0x2a1c] sm:$0xf]
  %v2796 = vld [vmem:[%s1 + $0x2a20] sm:$0xf]
  %v2797 = vld [vmem:[%s1 + $0x2a24] sm:$0xf]
  %v2798 = vld [vmem:[%s1 + $0x2a28] sm:$0xf]
  %v2799 = vld [vmem:[%s1 + $0x2a2c] sm:$0xf]
  %v2800 = vld [vmem:[%s1 + $0x2a30] sm:$0xf]
  %v2801 = vld [vmem:[%s1 + $0x2a34] sm:$0xf]
  %v2802 = vld [vmem:[%s1 + $0x2a38] sm:$0xf]
  %v2803 = vld [vmem:[%s1 + $0x2a3c] sm:$0xf]
  %v2804 = vld [vmem:[%s2] sm:$0x1]
  %v2806 = vlaneseq
  %v2807 = vshrl.u32 %v2806, 7
  %v2808 = vsub.s32 0, %v2807
  %v2809 = vrot.slane %v2804, %v2808
  %v2896 = vunpack.c.l.b16 %v15
  %v2897 = vunpack.c.h.b16 %v15
  %v2898 = vunpack.c.l.b16 %v16
  %v2899 = vunpack.c.h.b16 %v16
  %v2900 = vunpack.c.l.b16 %v17
  %v2901 = vunpack.c.h.b16 %v17
  %v2902 = vunpack.c.l.b16 %v18
  %v2903 = vunpack.c.h.b16 %v18
  %v2904 = vunpack.c.l.b16 %v19
  %v2905 = vunpack.c.h.b16 %v19
  %v2906 = vunpack.c.l.b16 %v20
  %v2907 = vunpack.c.h.b16 %v20
  %v2908 = vunpack.c.l.b16 %v21
  %v2909 = vunpack.c.h.b16 %v21
  %v2910 = vunpack.c.l.b16 %v22
  %v2911 = vunpack.c.h.b16 %v22
  %v2912 = vunpack.c.l.b16 %v23
  %v2913 = vunpack.c.h.b16 %v23
  %v2914 = vunpack.c.l.b16 %v24
  %v2915 = vunpack.c.h.b16 %v24
  %v2916 = vunpack.c.l.b16 %v25
  %v2917 = vunpack.c.h.b16 %v25
  %v2918 = vunpack.c.l.b16 %v26
  %v2919 = vunpack.c.h.b16 %v26
  %v2920 = vunpack.c.l.b16 %v27
  %v2921 = vunpack.c.h.b16 %v27
  %v2922 = vunpack.c.l.b16 %v28
  %v2923 = vunpack.c.h.b16 %v28
  %v2924 = vunpack.c.l.b16 %v29
  %v2925 = vunpack.c.h.b16 %v29
  %v2926 = vunpack.c.l.b16 %v30
  %v2927 = vunpack.c.h.b16 %v30
  %v2928 = vunpack.c.l.b16 %v31
  %v2929 = vunpack.c.h.b16 %v31
  %v2930 = vunpack.c.l.b16 %v32
  %v2931 = vunpack.c.h.b16 %v32
  %v2932 = vunpack.c.l.b16 %v33
  %v2933 = vunpack.c.h.b16 %v33
  %v2934 = vunpack.c.l.b16 %v34
  %v2935 = vunpack.c.h.b16 %v34
  %v2936 = vunpack.c.l.b16 %v35
  %v2937 = vunpack.c.h.b16 %v35
  %v2938 = vunpack.c.l.b16 %v36
  %v2939 = vunpack.c.h.b16 %v36
  %v2940 = vunpack.c.l.b16 %v37
  %v2941 = vunpack.c.h.b16 %v37
  %v2942 = vunpack.c.l.b16 %v38
  %v2943 = vunpack.c.h.b16 %v38
  %v2944 = vunpack.c.l.b16 %v39
  %v2945 = vunpack.c.h.b16 %v39
  %v2946 = vunpack.c.l.b16 %v40
  %v2947 = vunpack.c.h.b16 %v40
  %v2948 = vunpack.c.l.b16 %v41
  %v2949 = vunpack.c.h.b16 %v41
  %v2950 = vunpack.c.l.b16 %v42
  %v2951 = vunpack.c.h.b16 %v42
  %v2952 = vunpack.c.l.b16 %v43
  %v2953 = vunpack.c.h.b16 %v43
  %v2954 = vunpack.c.l.b16 %v44
  %v2955 = vunpack.c.h.b16 %v44
  %v2956 = vunpack.c.l.b16 %v45
  %v2957 = vunpack.c.h.b16 %v45
  %v2958 = vunpack.c.l.b16 %v46
  %v2959 = vunpack.c.h.b16 %v46
  %v2960 = vunpack.c.l.b16 %v47
  %v2961 = vunpack.c.h.b16 %v47
  %v2962 = vunpack.c.l.b16 %v48
  %v2963 = vunpack.c.h.b16 %v48
  %v2964 = vunpack.c.l.b16 %v49
  %v2965 = vunpack.c.h.b16 %v49
  %v2966 = vunpack.c.l.b16 %v50
  %v2967 = vunpack.c.h.b16 %v50
  %v2968 = vunpack.c.l.b16 %v51
  %v2969 = vunpack.c.h.b16 %v51
  %v2970 = vunpack.c.l.b16 %v52
  %v2971 = vunpack.c.h.b16 %v52
  %v2972 = vunpack.c.l.b16 %v53
  %v2973 = vunpack.c.h.b16 %v53
  %v2974 = vunpack.c.l.b16 %v54
  %v2975 = vunpack.c.h.b16 %v54
  %v2976 = vunpack.c.l.b16 %v55
  %v2977 = vunpack.c.h.b16 %v55
  %v2978 = vunpack.c.l.b16 %v56
  %v2979 = vunpack.c.h.b16 %v56
  %v2980 = vunpack.c.l.b16 %v57
  %v2981 = vunpack.c.h.b16 %v57
  %v2982 = vunpack.c.l.b16 %v58
  %v2983 = vunpack.c.h.b16 %v58
  %v2984 = vunpack.c.l.b16 %v59
  %v2985 = vunpack.c.h.b16 %v59
  %v2986 = vunpack.c.l.b16 %v60
  %v2987 = vunpack.c.h.b16 %v60
  %v2988 = vunpack.c.l.b16 %v61
  %v2989 = vunpack.c.h.b16 %v61
  %v2990 = vunpack.c.l.b16 %v62
  %v2991 = vunpack.c.h.b16 %v62
  %v2992 = vunpack.c.l.b16 %v63
  %v2993 = vunpack.c.h.b16 %v63
  %v2994 = vunpack.c.l.b16 %v64
  %v2995 = vunpack.c.h.b16 %v64
  %v2996 = vunpack.c.l.b16 %v65
  %v2997 = vunpack.c.h.b16 %v65
  %v2998 = vunpack.c.l.b16 %v66
  %v2999 = vunpack.c.h.b16 %v66
  %v3000 = vunpack.c.l.b16 %v67
  %v3001 = vunpack.c.h.b16 %v67
  %v3002 = vunpack.c.l.b16 %v68
  %v3003 = vunpack.c.h.b16 %v68
  %v3004 = vunpack.c.l.b16 %v69
  %v3005 = vunpack.c.h.b16 %v69
  %v3006 = vunpack.c.l.b16 %v70
  %v3007 = vunpack.c.h.b16 %v70
  %v3008 = vunpack.c.l.b16 %v71
  %v3009 = vunpack.c.h.b16 %v71
  %v3010 = vunpack.c.l.b16 %v72
  %v3011 = vunpack.c.h.b16 %v72
  %v3012 = vunpack.c.l.b16 %v73
  %v3013 = vunpack.c.h.b16 %v73
  %v3014 = vunpack.c.l.b16 %v74
  %v3015 = vunpack.c.h.b16 %v74
  %v3016 = vunpack.c.l.b16 %v75
  %v3017 = vunpack.c.h.b16 %v75
  %v3018 = vunpack.c.l.b16 %v76
  %v3019 = vunpack.c.h.b16 %v76
  %v3020 = vunpack.c.l.b16 %v77
  %v3021 = vunpack.c.h.b16 %v77
  %v3022 = vunpack.c.l.b16 %v78
  %v3023 = vunpack.c.h.b16 %v78
  %v3024 = vunpack.c.l.b16 %v79
  %v3025 = vunpack.c.h.b16 %v79
  %v3026 = vunpack.c.l.b16 %v80
  %v3027 = vunpack.c.h.b16 %v80
  %v3028 = vunpack.c.l.b16 %v81
  %v3029 = vunpack.c.h.b16 %v81
  %v3030 = vunpack.c.l.b16 %v82
  %v3031 = vunpack.c.h.b16 %v82
  %v3032 = vunpack.c.l.b16 %v83
  %v3033 = vunpack.c.h.b16 %v83
  %v3034 = vunpack.c.l.b16 %v84
  %v3035 = vunpack.c.h.b16 %v84
  %v3036 = vunpack.c.l.b16 %v85
  %v3037 = vunpack.c.h.b16 %v85
  %v3038 = vunpack.c.l.b16 %v86
  %v3039 = vunpack.c.h.b16 %v86
  %v3040 = vunpack.c.l.b16 %v87
  %v3041 = vunpack.c.h.b16 %v87
  %v3042 = vunpack.c.l.b16 %v88
  %v3043 = vunpack.c.h.b16 %v88
  %v3044 = vunpack.c.l.b16 %v89
  %v3045 = vunpack.c.h.b16 %v89
  %v3046 = vunpack.c.l.b16 %v90
  %v3047 = vunpack.c.h.b16 %v90
  %v3048 = vunpack.c.l.b16 %v91
  %v3049 = vunpack.c.h.b16 %v91
  %v3050 = vunpack.c.l.b16 %v92
  %v3051 = vunpack.c.h.b16 %v92
  %v3052 = vunpack.c.l.b16 %v93
  %v3053 = vunpack.c.h.b16 %v93
  %v3054 = vunpack.c.l.b16 %v94
  %v3055 = vunpack.c.h.b16 %v94
  %v3056 = vunpack.c.l.b16 %v95
  %v3057 = vunpack.c.h.b16 %v95
  %v3058 = vunpack.c.l.b16 %v96
  %v3059 = vunpack.c.h.b16 %v96
  %v3060 = vunpack.c.l.b16 %v97
  %v3061 = vunpack.c.h.b16 %v97
  %v3062 = vunpack.c.l.b16 %v98
  %v3063 = vunpack.c.h.b16 %v98
  %v3064 = vunpack.c.l.b16 %v99
  %v3065 = vpack.c.b16 %v2896, %v2896
  %v3066 = vpack.c.b16 %v2897, %v2897
  %v3067 = vpack.c.b16 %v2898, %v2898
  %v3068 = vpack.c.b16 %v2899, %v2899
  %v3069 = vpack.c.b16 %v2900, %v2900
  %v3070 = vpack.c.b16 %v2901, %v2901
  %v3071 = vpack.c.b16 %v2902, %v2902
  %v3072 = vpack.c.b16 %v2903, %v2903
  %v3073 = vpack.c.b16 %v2904, %v2904
  %v3074 = vpack.c.b16 %v2905, %v2905
  %v3075 = vpack.c.b16 %v2906, %v2906
  %v3076 = vpack.c.b16 %v2907, %v2907
  %v3077 = vpack.c.b16 %v2908, %v2908
  %v3078 = vpack.c.b16 %v2909, %v2909
  %v3079 = vpack.c.b16 %v2910, %v2910
  %v3080 = vpack.c.b16 %v2911, %v2911
  %v3081 = vpack.c.b16 %v2912, %v2912
  %v3082 = vpack.c.b16 %v2913, %v2913
  %v3083 = vpack.c.b16 %v2914, %v2914
  %v3084 = vpack.c.b16 %v2915, %v2915
  %v3085 = vpack.c.b16 %v2916, %v2916
  %v3086 = vpack.c.b16 %v2917, %v2917
  %v3087 = vpack.c.b16 %v2918, %v2918
  %v3088 = vpack.c.b16 %v2919, %v2919
  %v3089 = vpack.c.b16 %v2920, %v2920
  %v3090 = vpack.c.b16 %v2921, %v2921
  %v3091 = vpack.c.b16 %v2922, %v2922
  %v3092 = vpack.c.b16 %v2923, %v2923
  %v3093 = vpack.c.b16 %v2924, %v2924
  %v3094 = vpack.c.b16 %v2925, %v2925
  %v3095 = vpack.c.b16 %v2926, %v2926
  %v3096 = vpack.c.b16 %v2927, %v2927
  %v3097 = vpack.c.b16 %v2928, %v2928
  %v3098 = vpack.c.b16 %v2929, %v2929
  %v3099 = vpack.c.b16 %v2930, %v2930
  %v3100 = vpack.c.b16 %v2931, %v2931
  %v3101 = vpack.c.b16 %v2932, %v2932
  %v3102 = vpack.c.b16 %v2933, %v2933
  %v3103 = vpack.c.b16 %v2934, %v2934
  %v3104 = vpack.c.b16 %v2935, %v2935
  %v3105 = vpack.c.b16 %v2936, %v2936
  %v3106 = vpack.c.b16 %v2937, %v2937
  %v3107 = vpack.c.b16 %v2938, %v2938
  %v3108 = vpack.c.b16 %v2939, %v2939
  %v3109 = vpack.c.b16 %v2940, %v2940
  %v3110 = vpack.c.b16 %v2941, %v2941
  %v3111 = vpack.c.b16 %v2942, %v2942
  %v3112 = vpack.c.b16 %v2943, %v2943
  %v3113 = vpack.c.b16 %v2944, %v2944
  %v3114 = vpack.c.b16 %v2945, %v2945
  %v3115 = vpack.c.b16 %v2946, %v2946
  %v3116 = vpack.c.b16 %v2947, %v2947
  %v3117 = vpack.c.b16 %v2948, %v2948
  %v3118 = vpack.c.b16 %v2949, %v2949
  %v3119 = vpack.c.b16 %v2950, %v2950
  %v3120 = vpack.c.b16 %v2951, %v2951
  %v3121 = vpack.c.b16 %v2952, %v2952
  %v3122 = vpack.c.b16 %v2953, %v2953
  %v3123 = vpack.c.b16 %v2954, %v2954
  %v3124 = vpack.c.b16 %v2955, %v2955
  %v3125 = vpack.c.b16 %v2956, %v2956
  %v3126 = vpack.c.b16 %v2957, %v2957
  %v3127 = vpack.c.b16 %v2958, %v2958
  %v3128 = vpack.c.b16 %v2959, %v2959
  %v3129 = vpack.c.b16 %v2960, %v2960
  %v3130 = vpack.c.b16 %v2961, %v2961
  %v3131 = vpack.c.b16 %v2962, %v2962
  %v3132 = vpack.c.b16 %v2963, %v2963
  %v3133 = vpack.c.b16 %v2964, %v2964
  %v3134 = vpack.c.b16 %v2965, %v2965
  %v3135 = vpack.c.b16 %v2966, %v2966
  %v3136 = vpack.c.b16 %v2967, %v2967
  %v3137 = vpack.c.b16 %v2968, %v2968
  %v3138 = vpack.c.b16 %v2969, %v2969
  %v3139 = vpack.c.b16 %v2970, %v2970
  %v3140 = vpack.c.b16 %v2971, %v2971
  %v3141 = vpack.c.b16 %v2972, %v2972
  %v3142 = vpack.c.b16 %v2973, %v2973
  %v3143 = vpack.c.b16 %v2974, %v2974
  %v3144 = vpack.c.b16 %v2975, %v2975
  %v3145 = vpack.c.b16 %v2976, %v2976
  %v3146 = vpack.c.b16 %v2977, %v2977
  %v3147 = vpack.c.b16 %v2978, %v2978
  %v3148 = vpack.c.b16 %v2979, %v2979
  %v3149 = vpack.c.b16 %v2980, %v2980
  %v3150 = vpack.c.b16 %v2981, %v2981
  %v3151 = vpack.c.b16 %v2982, %v2982
  %v3152 = vpack.c.b16 %v2983, %v2983
  %v3153 = vpack.c.b16 %v2984, %v2984
  %v3154 = vpack.c.b16 %v2985, %v2985
  %v3155 = vpack.c.b16 %v2986, %v2986
  %v3156 = vpack.c.b16 %v2987, %v2987
  %v3157 = vpack.c.b16 %v2988, %v2988
  %v3158 = vpack.c.b16 %v2989, %v2989
  %v3159 = vpack.c.b16 %v2990, %v2990
  %v3160 = vpack.c.b16 %v2991, %v2991
  %v3161 = vpack.c.b16 %v2992, %v2992
  %v3162 = vpack.c.b16 %v2993, %v2993
  %v3163 = vpack.c.b16 %v2994, %v2994
  %v3164 = vpack.c.b16 %v2995, %v2995
  %v3165 = vpack.c.b16 %v2996, %v2996
  %v3166 = vpack.c.b16 %v2997, %v2997
  %v3167 = vpack.c.b16 %v2998, %v2998
  %v3168 = vpack.c.b16 %v2999, %v2999
  %v3169 = vpack.c.b16 %v3000, %v3000
  %v3170 = vpack.c.b16 %v3001, %v3001
  %v3171 = vpack.c.b16 %v3002, %v3002
  %v3172 = vpack.c.b16 %v3003, %v3003
  %v3173 = vpack.c.b16 %v3004, %v3004
  %v3174 = vpack.c.b16 %v3005, %v3005
  %v3175 = vpack.c.b16 %v3006, %v3006
  %v3176 = vpack.c.b16 %v3007, %v3007
  %v3177 = vpack.c.b16 %v3008, %v3008
  %v3178 = vpack.c.b16 %v3009, %v3009
  %v3179 = vpack.c.b16 %v3010, %v3010
  %v3180 = vpack.c.b16 %v3011, %v3011
  %v3181 = vpack.c.b16 %v3012, %v3012
  %v3182 = vpack.c.b16 %v3013, %v3013
  %v3183 = vpack.c.b16 %v3014, %v3014
  %v3184 = vpack.c.b16 %v3015, %v3015
  %v3185 = vpack.c.b16 %v3016, %v3016
  %v3186 = vpack.c.b16 %v3017, %v3017
  %v3187 = vpack.c.b16 %v3018, %v3018
  %v3188 = vpack.c.b16 %v3019, %v3019
  %v3189 = vpack.c.b16 %v3020, %v3020
  %v3190 = vpack.c.b16 %v3021, %v3021
  %v3191 = vpack.c.b16 %v3022, %v3022
  %v3192 = vpack.c.b16 %v3023, %v3023
  %v3193 = vpack.c.b16 %v3024, %v3024
  %v3194 = vpack.c.b16 %v3025, %v3025
  %v3195 = vpack.c.b16 %v3026, %v3026
  %v3196 = vpack.c.b16 %v3027, %v3027
  %v3197 = vpack.c.b16 %v3028, %v3028
  %v3198 = vpack.c.b16 %v3029, %v3029
  %v3199 = vpack.c.b16 %v3030, %v3030
  %v3200 = vpack.c.b16 %v3031, %v3031
  %v3201 = vpack.c.b16 %v3032, %v3032
  %v3202 = vpack.c.b16 %v3033, %v3033
  %v3203 = vpack.c.b16 %v3034, %v3034
  %v3204 = vpack.c.b16 %v3035, %v3035
  %v3205 = vpack.c.b16 %v3036, %v3036
  %v3206 = vpack.c.b16 %v3037, %v3037
  %v3207 = vpack.c.b16 %v3038, %v3038
  %v3208 = vpack.c.b16 %v3039, %v3039
  %v3209 = vpack.c.b16 %v3040, %v3040
  %v3210 = vpack.c.b16 %v3041, %v3041
  %v3211 = vpack.c.b16 %v3042, %v3042
  %v3212 = vpack.c.b16 %v3043, %v3043
  %v3213 = vpack.c.b16 %v3044, %v3044
  %v3214 = vpack.c.b16 %v3045, %v3045
  %v3215 = vpack.c.b16 %v3046, %v3046
  %v3216 = vpack.c.b16 %v3047, %v3047
  %v3217 = vpack.c.b16 %v3048, %v3048
  %v3218 = vpack.c.b16 %v3049, %v3049
  %v3219 = vpack.c.b16 %v3050, %v3050
  %v3220 = vpack.c.b16 %v3051, %v3051
  %v3221 = vpack.c.b16 %v3052, %v3052
  %v3222 = vpack.c.b16 %v3053, %v3053
  %v3223 = vpack.c.b16 %v3054, %v3054
  %v3224 = vpack.c.b16 %v3055, %v3055
  %v3225 = vpack.c.b16 %v3056, %v3056
  %v3226 = vpack.c.b16 %v3057, %v3057
  %v3227 = vpack.c.b16 %v3058, %v3058
  %v3228 = vpack.c.b16 %v3059, %v3059
  %v3229 = vpack.c.b16 %v3060, %v3060
  %v3230 = vpack.c.b16 %v3061, %v3061
  %v3231 = vpack.c.b16 %v3062, %v3062
  %v3232 = vpack.c.b16 %v3063, %v3063
  %v3233 = vpack.c.b16 %v3064, %v3064
  %v6107 = vunpack.c.l.b16 %v100
  %v6108 = vunpack.c.l.b16 %v101
  %v6109 = vunpack.c.l.b16 %v102
  %v6110 = vunpack.c.l.b16 %v103
  %v6111 = vunpack.c.l.b16 %v104
  %v6112 = vunpack.c.l.b16 %v105
  %v6113 = vunpack.c.l.b16 %v106
  %v6114 = vunpack.c.l.b16 %v107
  %v6115 = vunpack.c.l.b16 %v108
  %v6116 = vunpack.c.l.b16 %v109
  %v6117 = vunpack.c.l.b16 %v110
  %v6118 = vunpack.c.l.b16 %v111
  %v6119 = vunpack.c.l.b16 %v112
  %v6120 = vunpack.c.l.b16 %v113
  %v6121 = vunpack.c.l.b16 %v114
  %v6122 = vunpack.c.l.b16 %v115
  %v6123 = vunpack.c.l.b16 %v116
  %v6124 = vunpack.c.l.b16 %v117
  %v6125 = vunpack.c.l.b16 %v118
  %v6126 = vunpack.c.l.b16 %v119
  %v6127 = vunpack.c.l.b16 %v120
  %v6128 = vunpack.c.l.b16 %v121
  %v6129 = vunpack.c.l.b16 %v122
  %v6130 = vunpack.c.l.b16 %v123
  %v6131 = vunpack.c.l.b16 %v124
  %v6132 = vunpack.c.l.b16 %v125
  %v6133 = vunpack.c.l.b16 %v126
  %v6134 = vunpack.c.l.b16 %v127
  %v6135 = vunpack.c.l.b16 %v128
  %v6136 = vunpack.c.l.b16 %v129
  %v6137 = vunpack.c.l.b16 %v130
  %v6138 = vunpack.c.l.b16 %v131
  %v6139 = vunpack.c.l.b16 %v132
  %v6140 = vunpack.c.l.b16 %v133
  %v6141 = vunpack.c.l.b16 %v134
  %v6142 = vunpack.c.l.b16 %v135
  %v6143 = vunpack.c.l.b16 %v136
  %v6144 = vunpack.c.l.b16 %v137
  %v6145 = vunpack.c.l.b16 %v138
  %v6146 = vunpack.c.l.b16 %v139
  %v6147 = vunpack.c.l.b16 %v140
  %v6148 = vunpack.c.l.b16 %v141
  %v6149 = vunpack.c.l.b16 %v142
  %v6150 = vunpack.c.l.b16 %v143
  %v6151 = vunpack.c.l.b16 %v144
  %v6152 = vunpack.c.l.b16 %v145
  %v6153 = vunpack.c.l.b16 %v146
  %v6154 = vunpack.c.l.b16 %v147
  %v6155 = vunpack.c.l.b16 %v148
  %v6156 = vunpack.c.l.b16 %v149
  %v6157 = vunpack.c.l.b16 %v150
  %v6158 = vunpack.c.l.b16 %v151
  %v6159 = vunpack.c.l.b16 %v152
  %v6160 = vunpack.c.l.b16 %v153
  %v6161 = vunpack.c.l.b16 %v154
  %v6162 = vunpack.c.l.b16 %v155
  %v6163 = vunpack.c.l.b16 %v156
  %v6164 = vunpack.c.l.b16 %v157
  %v6165 = vunpack.c.l.b16 %v158
  %v6166 = vunpack.c.l.b16 %v159
  %v6167 = vunpack.c.l.b16 %v160
  %v6168 = vunpack.c.l.b16 %v161
  %v6169 = vunpack.c.l.b16 %v162
  %v6170 = vunpack.c.l.b16 %v163
  %v6171 = vunpack.c.l.b16 %v164
  %v6172 = vunpack.c.l.b16 %v165
  %v6173 = vunpack.c.l.b16 %v166
  %v6174 = vunpack.c.l.b16 %v167
  %v6175 = vunpack.c.l.b16 %v168
  %v6176 = vunpack.c.l.b16 %v169
  %v6177 = vunpack.c.l.b16 %v170
  %v6178 = vunpack.c.l.b16 %v171
  %v6179 = vunpack.c.l.b16 %v172
  %v6180 = vunpack.c.l.b16 %v173
  %v6181 = vunpack.c.l.b16 %v174
  %v6182 = vunpack.c.l.b16 %v175
  %v6183 = vunpack.c.l.b16 %v176
  %v6184 = vunpack.c.l.b16 %v177
  %v6185 = vunpack.c.l.b16 %v178
  %v6186 = vunpack.c.l.b16 %v179
  %v6187 = vunpack.c.l.b16 %v180
  %v6188 = vunpack.c.l.b16 %v181
  %v6189 = vunpack.c.l.b16 %v182
  %v6190 = vunpack.c.l.b16 %v183
  %v6191 = vunpack.c.l.b16 %v184
  %v6192 = vunpack.c.l.b16 %v185
  %v6193 = vunpack.c.l.b16 %v186
  %v6194 = vunpack.c.l.b16 %v187
  %v6195 = vunpack.c.l.b16 %v188
  %v6196 = vunpack.c.l.b16 %v189
  %v6197 = vunpack.c.l.b16 %v190
  %v6198 = vunpack.c.l.b16 %v191
  %v6199 = vunpack.c.l.b16 %v192
  %v6200 = vunpack.c.l.b16 %v193
  %v6201 = vunpack.c.l.b16 %v194
  %v6202 = vunpack.c.l.b16 %v195
  %v6203 = vunpack.c.l.b16 %v196
  %v6204 = vunpack.c.l.b16 %v197
  %v6205 = vunpack.c.l.b16 %v198
  %v6206 = vunpack.c.l.b16 %v199
  %v6207 = vunpack.c.l.b16 %v200
  %v6208 = vunpack.c.l.b16 %v201
  %v6209 = vunpack.c.l.b16 %v202
  %v6210 = vunpack.c.l.b16 %v203
  %v6211 = vunpack.c.l.b16 %v204
  %v6212 = vunpack.c.l.b16 %v205
  %v6213 = vunpack.c.l.b16 %v206
  %v6214 = vunpack.c.l.b16 %v207
  %v6215 = vunpack.c.l.b16 %v208
  %v6216 = vunpack.c.l.b16 %v209
  %v6217 = vunpack.c.l.b16 %v210
  %v6218 = vunpack.c.l.b16 %v211
  %v6219 = vunpack.c.l.b16 %v212
  %v6220 = vunpack.c.l.b16 %v213
  %v6221 = vunpack.c.l.b16 %v214
  %v6222 = vunpack.c.l.b16 %v215
  %v6223 = vunpack.c.l.b16 %v216
  %v6224 = vunpack.c.l.b16 %v217
  %v6225 = vunpack.c.l.b16 %v218
  %v6226 = vunpack.c.l.b16 %v219
  %v6227 = vunpack.c.l.b16 %v220
  %v6228 = vunpack.c.l.b16 %v221
  %v6229 = vunpack.c.l.b16 %v222
  %v6230 = vunpack.c.l.b16 %v223
  %v6231 = vunpack.c.l.b16 %v224
  %v6232 = vunpack.c.l.b16 %v225
  %v6233 = vunpack.c.l.b16 %v226
  %v6234 = vunpack.c.l.b16 %v227
  %v6235 = vunpack.c.l.b16 %v228
  %v6236 = vunpack.c.l.b16 %v229
  %v6237 = vunpack.c.l.b16 %v230
  %v6238 = vunpack.c.l.b16 %v231
  %v6239 = vunpack.c.l.b16 %v232
  %v6240 = vunpack.c.l.b16 %v233
  %v6241 = vunpack.c.l.b16 %v234
  %v6242 = vunpack.c.l.b16 %v235
  %v6243 = vunpack.c.l.b16 %v236
  %v6244 = vunpack.c.l.b16 %v237
  %v6245 = vunpack.c.l.b16 %v238
  %v6246 = vunpack.c.l.b16 %v239
  %v6247 = vunpack.c.l.b16 %v240
  %v6248 = vunpack.c.l.b16 %v241
  %v6249 = vunpack.c.l.b16 %v242
  %v6250 = vunpack.c.l.b16 %v243
  %v6251 = vunpack.c.l.b16 %v244
  %v6252 = vunpack.c.l.b16 %v245
  %v6253 = vunpack.c.l.b16 %v246
  %v6254 = vunpack.c.l.b16 %v247
  %v6255 = vunpack.c.l.b16 %v248
  %v6256 = vunpack.c.l.b16 %v249
  %v6257 = vunpack.c.l.b16 %v250
  %v6258 = vunpack.c.l.b16 %v251
  %v6259 = vunpack.c.l.b16 %v252
  %v6260 = vunpack.c.l.b16 %v253
  %v6261 = vunpack.c.l.b16 %v254
  %v6262 = vunpack.c.l.b16 %v255
  %v6263 = vunpack.c.l.b16 %v256
  %v6264 = vunpack.c.l.b16 %v257
  %v6265 = vunpack.c.l.b16 %v258
  %v6266 = vunpack.c.l.b16 %v259
  %v6267 = vunpack.c.l.b16 %v260
  %v6268 = vunpack.c.l.b16 %v261
  %v6269 = vunpack.c.l.b16 %v262
  %v6270 = vunpack.c.l.b16 %v263
  %v6271 = vunpack.c.l.b16 %v264
  %v6272 = vunpack.c.l.b16 %v265
  %v6273 = vunpack.c.l.b16 %v266
  %v6274 = vunpack.c.l.b16 %v267
  %v6275 = vunpack.c.l.b16 %v268
  %v6276 = vunpack.c.l.b16 %v269
  %v6277 = vunpack.c.l.b16 %v270
  %v6278 = vunpack.c.l.b16 %v271
  %v6279 = vunpack.c.l.b16 %v272
  %v6280 = vunpack.c.l.b16 %v273
  %v6281 = vunpack.c.l.b16 %v274
  %v6282 = vunpack.c.l.b16 %v275
  %v6283 = vunpack.c.l.b16 %v276
  %v6284 = vunpack.c.l.b16 %v277
  %v6285 = vunpack.c.l.b16 %v278
  %v6286 = vunpack.c.l.b16 %v279
  %v6287 = vunpack.c.l.b16 %v280
  %v6288 = vunpack.c.l.b16 %v281
  %v6289 = vunpack.c.l.b16 %v282
  %v6290 = vunpack.c.l.b16 %v283
  %v6291 = vunpack.c.l.b16 %v284
  %v6292 = vunpack.c.l.b16 %v285
  %v6293 = vunpack.c.l.b16 %v286
  %v6294 = vunpack.c.l.b16 %v287
  %v6295 = vunpack.c.l.b16 %v288
  %v6296 = vunpack.c.l.b16 %v289
  %v6297 = vunpack.c.l.b16 %v290
  %v6298 = vunpack.c.l.b16 %v291
  %v6299 = vunpack.c.l.b16 %v292
  %v6300 = vunpack.c.l.b16 %v293
  %v6301 = vunpack.c.l.b16 %v294
  %v6302 = vunpack.c.l.b16 %v295
  %v6303 = vunpack.c.l.b16 %v296
  %v6304 = vunpack.c.l.b16 %v297
  %v6305 = vunpack.c.l.b16 %v298
  %v6306 = vunpack.c.l.b16 %v299
  %v6307 = vunpack.c.l.b16 %v300
  %v6308 = vunpack.c.l.b16 %v301
  %v6309 = vunpack.c.l.b16 %v302
  %v6310 = vunpack.c.l.b16 %v303
  %v6311 = vunpack.c.l.b16 %v304
  %v6312 = vunpack.c.l.b16 %v305
  %v6313 = vunpack.c.l.b16 %v306
  %v6314 = vunpack.c.l.b16 %v307
  %v6315 = vunpack.c.l.b16 %v308
  %v6316 = vunpack.c.l.b16 %v309
  %v6317 = vunpack.c.l.b16 %v310
  %v6318 = vunpack.c.l.b16 %v311
  %v6319 = vunpack.c.l.b16 %v312
  %v6320 = vunpack.c.l.b16 %v313
  %v6321 = vunpack.c.l.b16 %v314
  %v6322 = vunpack.c.l.b16 %v315
  %v6323 = vunpack.c.l.b16 %v316
  %v6324 = vunpack.c.l.b16 %v317
  %v6325 = vunpack.c.l.b16 %v318
  %v6326 = vunpack.c.l.b16 %v319
  %v6327 = vunpack.c.l.b16 %v320
  %v6328 = vunpack.c.l.b16 %v321
  %v6329 = vunpack.c.l.b16 %v322
  %v6330 = vunpack.c.l.b16 %v323
  %v6331 = vunpack.c.l.b16 %v324
  %v6332 = vunpack.c.l.b16 %v325
  %v6333 = vunpack.c.l.b16 %v326
  %v6334 = vunpack.c.l.b16 %v327
  %v6335 = vunpack.c.l.b16 %v328
  %v6336 = vunpack.c.l.b16 %v329
  %v6337 = vunpack.c.l.b16 %v330
  %v6338 = vunpack.c.l.b16 %v331
  %v6339 = vunpack.c.l.b16 %v332
  %v6340 = vunpack.c.l.b16 %v333
  %v6341 = vunpack.c.l.b16 %v334
  %v6342 = vunpack.c.l.b16 %v335
  %v6343 = vunpack.c.l.b16 %v336
  %v6344 = vunpack.c.l.b16 %v337
  %v6345 = vunpack.c.l.b16 %v338
  %v6346 = vunpack.c.l.b16 %v339
  %v6347 = vunpack.c.l.b16 %v340
  %v6348 = vunpack.c.l.b16 %v341
  %v6349 = vunpack.c.l.b16 %v342
  %v6350 = vunpack.c.l.b16 %v343
  %v6351 = vunpack.c.l.b16 %v344
  %v6352 = vunpack.c.l.b16 %v345
  %v6353 = vunpack.c.l.b16 %v346
  %v6354 = vunpack.c.l.b16 %v347
  %v6355 = vunpack.c.l.b16 %v348
  %v6356 = vunpack.c.l.b16 %v349
  %v6357 = vunpack.c.l.b16 %v350
  %v6358 = vunpack.c.l.b16 %v351
  %v6359 = vunpack.c.l.b16 %v352
  %v6360 = vunpack.c.l.b16 %v353
  %v6361 = vunpack.c.l.b16 %v354
  %v6362 = vunpack.c.l.b16 %v355
  %v6363 = vunpack.c.l.b16 %v356
  %v6364 = vunpack.c.l.b16 %v357
  %v6365 = vunpack.c.l.b16 %v358
  %v6366 = vunpack.c.l.b16 %v359
  %v6367 = vunpack.c.l.b16 %v360
  %v6368 = vunpack.c.l.b16 %v361
  %v6369 = vunpack.c.l.b16 %v362
  %v6370 = vunpack.c.l.b16 %v363
  %v6371 = vunpack.c.l.b16 %v364
  %v6372 = vunpack.c.l.b16 %v365
  %v6373 = vunpack.c.l.b16 %v366
  %v6374 = vunpack.c.l.b16 %v367
  %v6375 = vunpack.c.l.b16 %v368
  %v6376 = vunpack.c.l.b16 %v369
  %v6377 = vunpack.c.l.b16 %v370
  %v6378 = vunpack.c.l.b16 %v371
  %v6379 = vunpack.c.l.b16 %v372
  %v6380 = vunpack.c.l.b16 %v373
  %v6381 = vunpack.c.l.b16 %v374
  %v6382 = vunpack.c.l.b16 %v375
  %v6383 = vunpack.c.l.b16 %v376
  %v6384 = vunpack.c.l.b16 %v377
  %v6385 = vunpack.c.l.b16 %v378
  %v6386 = vunpack.c.l.b16 %v379
  %v6387 = vunpack.c.l.b16 %v380
  %v6388 = vunpack.c.l.b16 %v381
  %v6389 = vunpack.c.l.b16 %v382
  %v6390 = vunpack.c.l.b16 %v383
  %v6391 = vunpack.c.l.b16 %v384
  %v6392 = vunpack.c.l.b16 %v385
  %v6393 = vunpack.c.l.b16 %v386
  %v6394 = vunpack.c.l.b16 %v387
  %v6395 = vunpack.c.l.b16 %v388
  %v6396 = vunpack.c.l.b16 %v389
  %v6397 = vunpack.c.l.b16 %v390
  %v6398 = vunpack.c.l.b16 %v391
  %v6399 = vunpack.c.l.b16 %v392
  %v6400 = vunpack.c.l.b16 %v393
  %v6401 = vunpack.c.l.b16 %v394
  %v6402 = vunpack.c.l.b16 %v395
  %v6403 = vunpack.c.l.b16 %v396
  %v6404 = vunpack.c.l.b16 %v397
  %v6405 = vunpack.c.l.b16 %v398
  %v6406 = vunpack.c.l.b16 %v399
  %v6407 = vunpack.c.l.b16 %v400
  %v6408 = vunpack.c.l.b16 %v401
  %v6409 = vunpack.c.l.b16 %v402
  %v6410 = vunpack.c.l.b16 %v403
  %v6411 = vunpack.c.l.b16 %v404
  %v6412 = vunpack.c.l.b16 %v405
  %v6413 = vunpack.c.l.b16 %v406
  %v6414 = vunpack.c.l.b16 %v407
  %v6415 = vunpack.c.l.b16 %v408
  %v6416 = vunpack.c.l.b16 %v409
  %v6417 = vunpack.c.l.b16 %v410
  %v6418 = vunpack.c.l.b16 %v411
  %v6419 = vunpack.c.l.b16 %v412
  %v6420 = vunpack.c.l.b16 %v413
  %v6421 = vunpack.c.l.b16 %v414
  %v6422 = vunpack.c.l.b16 %v415
  %v6423 = vunpack.c.l.b16 %v416
  %v6424 = vunpack.c.l.b16 %v417
  %v6425 = vunpack.c.l.b16 %v418
  %v6426 = vunpack.c.l.b16 %v419
  %v6427 = vunpack.c.l.b16 %v420
  %v6428 = vunpack.c.l.b16 %v421
  %v6429 = vunpack.c.l.b16 %v422
  %v6430 = vunpack.c.l.b16 %v423
  %v6431 = vunpack.c.l.b16 %v424
  %v6432 = vunpack.c.l.b16 %v425
  %v6433 = vunpack.c.l.b16 %v426
  %v6434 = vunpack.c.l.b16 %v427
  %v6435 = vunpack.c.l.b16 %v428
  %v6436 = vunpack.c.l.b16 %v429
  %v6437 = vunpack.c.l.b16 %v430
  %v6438 = vunpack.c.l.b16 %v431
  %v6439 = vunpack.c.l.b16 %v432
  %v6440 = vunpack.c.l.b16 %v433
  %v6441 = vunpack.c.l.b16 %v434
  %v6442 = vunpack.c.l.b16 %v435
  %v6443 = vunpack.c.l.b16 %v436
  %v6444 = vunpack.c.l.b16 %v437
  %v6445 = vunpack.c.l.b16 %v438
  %v6446 = vunpack.c.l.b16 %v439
  %v6447 = vunpack.c.l.b16 %v440
  %v6448 = vunpack.c.l.b16 %v441
  %v6449 = vunpack.c.l.b16 %v442
  %v6450 = vunpack.c.l.b16 %v443
  %v6451 = vunpack.c.l.b16 %v444
  %v6452 = vunpack.c.l.b16 %v445
  %v6453 = vunpack.c.l.b16 %v446
  %v6454 = vunpack.c.l.b16 %v447
  %v6455 = vunpack.c.l.b16 %v448
  %v6456 = vunpack.c.l.b16 %v449
  %v6457 = vunpack.c.l.b16 %v450
  %v6458 = vunpack.c.l.b16 %v451
  %v6459 = vunpack.c.l.b16 %v452
  %v6460 = vunpack.c.l.b16 %v453
  %v6461 = vunpack.c.l.b16 %v454
  %v6462 = vunpack.c.l.b16 %v455
  %v6463 = vunpack.c.l.b16 %v456
  %v6464 = vunpack.c.l.b16 %v457
  %v6465 = vunpack.c.l.b16 %v458
  %v6466 = vunpack.c.l.b16 %v459
  %v6467 = vunpack.c.l.b16 %v460
  %v6468 = vunpack.c.l.b16 %v461
  %v6469 = vunpack.c.l.b16 %v462
  %v6470 = vunpack.c.l.b16 %v463
  %v6471 = vunpack.c.l.b16 %v464
  %v6472 = vunpack.c.l.b16 %v465
  %v6473 = vunpack.c.l.b16 %v466
  %v6474 = vunpack.c.l.b16 %v467
  %v6475 = vunpack.c.l.b16 %v468
  %v6476 = vunpack.c.l.b16 %v469
  %v6477 = vunpack.c.l.b16 %v470
  %v6478 = vunpack.c.l.b16 %v471
  %v6479 = vunpack.c.l.b16 %v472
  %v6480 = vunpack.c.l.b16 %v473
  %v6481 = vunpack.c.l.b16 %v474
  %v6482 = vunpack.c.l.b16 %v475
  %v6483 = vunpack.c.l.b16 %v476
  %v6484 = vunpack.c.l.b16 %v477
  %v6485 = vunpack.c.l.b16 %v478
  %v6486 = vunpack.c.l.b16 %v479
  %v6487 = vunpack.c.l.b16 %v480
  %v6488 = vunpack.c.l.b16 %v481
  %v6489 = vunpack.c.l.b16 %v482
  %v6490 = vunpack.c.l.b16 %v483
  %v6491 = vunpack.c.l.b16 %v484
  %v6492 = vunpack.c.l.b16 %v485
  %v6493 = vunpack.c.l.b16 %v486
  %v6494 = vunpack.c.l.b16 %v487
  %v6495 = vunpack.c.l.b16 %v488
  %v6496 = vunpack.c.l.b16 %v489
  %v6497 = vunpack.c.l.b16 %v490
  %v6498 = vunpack.c.l.b16 %v491
  %v6499 = vunpack.c.l.b16 %v492
  %v6500 = vunpack.c.l.b16 %v493
  %v6501 = vunpack.c.l.b16 %v494
  %v6502 = vunpack.c.l.b16 %v495
  %v6503 = vunpack.c.l.b16 %v496
  %v6504 = vunpack.c.l.b16 %v497
  %v6505 = vunpack.c.l.b16 %v498
  %v6506 = vunpack.c.l.b16 %v499
  %v6507 = vunpack.c.l.b16 %v500
  %v6508 = vunpack.c.l.b16 %v501
  %v6509 = vunpack.c.l.b16 %v502
  %v6510 = vunpack.c.l.b16 %v503
  %v6511 = vunpack.c.l.b16 %v504
  %v6512 = vunpack.c.l.b16 %v505
  %v6513 = vunpack.c.l.b16 %v506
  %v6514 = vunpack.c.l.b16 %v507
  %v6515 = vunpack.c.l.b16 %v508
  %v6516 = vunpack.c.l.b16 %v509
  %v6517 = vunpack.c.l.b16 %v510
  %v6518 = vunpack.c.l.b16 %v511
  %v6519 = vunpack.c.l.b16 %v512
  %v6520 = vunpack.c.l.b16 %v513
  %v6521 = vunpack.c.l.b16 %v514
  %v6522 = vunpack.c.l.b16 %v515
  %v6523 = vunpack.c.l.b16 %v516
  %v6524 = vunpack.c.l.b16 %v517
  %v6525 = vunpack.c.l.b16 %v518
  %v6526 = vunpack.c.l.b16 %v519
  %v6527 = vunpack.c.l.b16 %v520
  %v6528 = vunpack.c.l.b16 %v521
  %v6529 = vunpack.c.l.b16 %v522
  %v6530 = vunpack.c.l.b16 %v523
  %v6531 = vunpack.c.l.b16 %v524
  %v6532 = vunpack.c.l.b16 %v525
  %v6533 = vunpack.c.l.b16 %v526
  %v6534 = vunpack.c.l.b16 %v527
  %v6535 = vunpack.c.l.b16 %v528
  %v6536 = vunpack.c.l.b16 %v529
  %v6537 = vunpack.c.l.b16 %v530
  %v6538 = vunpack.c.l.b16 %v531
  %v6539 = vunpack.c.l.b16 %v532
  %v6540 = vunpack.c.l.b16 %v533
  %v6541 = vunpack.c.l.b16 %v534
  %v6542 = vunpack.c.l.b16 %v535
  %v6543 = vunpack.c.l.b16 %v536
  %v6544 = vunpack.c.l.b16 %v537
  %v6545 = vunpack.c.l.b16 %v538
  %v6546 = vunpack.c.l.b16 %v539
  %v6547 = vunpack.c.l.b16 %v540
  %v6548 = vunpack.c.l.b16 %v541
  %v6549 = vunpack.c.l.b16 %v542
  %v6550 = vunpack.c.l.b16 %v543
  %v6551 = vunpack.c.l.b16 %v544
  %v6552 = vunpack.c.l.b16 %v545
  %v6553 = vunpack.c.l.b16 %v546
  %v6554 = vunpack.c.l.b16 %v547
  %v6555 = vunpack.c.l.b16 %v548
  %v6556 = vunpack.c.l.b16 %v549
  %v6557 = vunpack.c.l.b16 %v550
  %v6558 = vunpack.c.l.b16 %v551
  %v6559 = vunpack.c.l.b16 %v552
  %v6560 = vunpack.c.l.b16 %v553
  %v6561 = vunpack.c.l.b16 %v554
  %v6562 = vunpack.c.l.b16 %v555
  %v6563 = vunpack.c.l.b16 %v556
  %v6564 = vunpack.c.l.b16 %v557
  %v6565 = vunpack.c.l.b16 %v558
  %v6566 = vunpack.c.l.b16 %v559
  %v6567 = vunpack.c.l.b16 %v560
  %v6568 = vunpack.c.l.b16 %v561
  %v6569 = vunpack.c.l.b16 %v562
  %v6570 = vunpack.c.l.b16 %v563
  %v6571 = vunpack.c.l.b16 %v564
  %v6572 = vunpack.c.l.b16 %v565
  %v6573 = vunpack.c.l.b16 %v566
  %v6574 = vunpack.c.l.b16 %v567
  %v6575 = vunpack.c.l.b16 %v568
  %v6576 = vunpack.c.l.b16 %v569
  %v6577 = vunpack.c.l.b16 %v570
  %v6578 = vunpack.c.l.b16 %v571
  %v6579 = vunpack.c.l.b16 %v572
  %v6580 = vunpack.c.l.b16 %v573
  %v6581 = vunpack.c.l.b16 %v574
  %v6582 = vunpack.c.l.b16 %v575
  %v6583 = vunpack.c.l.b16 %v576
  %v6584 = vunpack.c.l.b16 %v577
  %v6585 = vunpack.c.l.b16 %v578
  %v6586 = vunpack.c.l.b16 %v579
  %v6587 = vunpack.c.l.b16 %v580
  %v6588 = vunpack.c.l.b16 %v581
  %v6589 = vunpack.c.l.b16 %v582
  %v6590 = vunpack.c.l.b16 %v583
  %v6591 = vunpack.c.l.b16 %v584
  %v6592 = vunpack.c.l.b16 %v585
  %v6593 = vunpack.c.l.b16 %v586
  %v6594 = vunpack.c.l.b16 %v587
  %v6595 = vunpack.c.l.b16 %v588
  %v6596 = vunpack.c.l.b16 %v589
  %v6597 = vunpack.c.l.b16 %v590
  %v6598 = vunpack.c.l.b16 %v591
  %v6599 = vunpack.c.l.b16 %v592
  %v6600 = vunpack.c.l.b16 %v593
  %v6601 = vunpack.c.l.b16 %v594
  %v6602 = vunpack.c.l.b16 %v595
  %v6603 = vunpack.c.l.b16 %v596
  %v6604 = vunpack.c.l.b16 %v597
  %v6605 = vunpack.c.l.b16 %v598
  %v6606 = vunpack.c.l.b16 %v599
  %v6607 = vunpack.c.l.b16 %v600
  %v6608 = vunpack.c.l.b16 %v601
  %v6609 = vunpack.c.l.b16 %v602
  %v6610 = vunpack.c.l.b16 %v603
  %v6611 = vunpack.c.l.b16 %v604
  %v6612 = vunpack.c.l.b16 %v605
  %v6613 = vunpack.c.l.b16 %v606
  %v6614 = vunpack.c.l.b16 %v607
  %v6615 = vunpack.c.l.b16 %v608
  %v6616 = vunpack.c.l.b16 %v609
  %v6617 = vunpack.c.l.b16 %v610
  %v6618 = vunpack.c.l.b16 %v611
  %v6619 = vunpack.c.l.b16 %v612
  %v6620 = vunpack.c.l.b16 %v613
  %v6621 = vunpack.c.l.b16 %v614
  %v6622 = vunpack.c.l.b16 %v615
  %v6623 = vunpack.c.l.b16 %v616
  %v6624 = vunpack.c.l.b16 %v617
  %v6625 = vunpack.c.l.b16 %v618
  %v6626 = vunpack.c.l.b16 %v619
  %v6627 = vunpack.c.l.b16 %v620
  %v6628 = vunpack.c.l.b16 %v621
  %v6629 = vunpack.c.l.b16 %v622
  %v6630 = vunpack.c.l.b16 %v623
  %v6631 = vunpack.c.l.b16 %v624
  %v6632 = vunpack.c.l.b16 %v625
  %v6633 = vunpack.c.l.b16 %v626
  %v6634 = vunpack.c.l.b16 %v627
  %v6635 = vunpack.c.l.b16 %v628
  %v6636 = vunpack.c.l.b16 %v629
  %v6637 = vunpack.c.l.b16 %v630
  %v6638 = vunpack.c.l.b16 %v631
  %v6639 = vunpack.c.l.b16 %v632
  %v6640 = vunpack.c.l.b16 %v633
  %v6641 = vunpack.c.l.b16 %v634
  %v6642 = vunpack.c.l.b16 %v635
  %v6643 = vunpack.c.l.b16 %v636
  %v6644 = vunpack.c.l.b16 %v637
  %v6645 = vunpack.c.l.b16 %v638
  %v6646 = vunpack.c.l.b16 %v639
  %v6647 = vunpack.c.l.b16 %v640
  %v6648 = vunpack.c.l.b16 %v641
  %v6649 = vunpack.c.l.b16 %v642
  %v6650 = vunpack.c.l.b16 %v643
  %v6651 = vunpack.c.l.b16 %v644
  %v6652 = vunpack.c.l.b16 %v645
  %v6653 = vunpack.c.l.b16 %v646
  %v6654 = vunpack.c.l.b16 %v647
  %v6655 = vunpack.c.l.b16 %v648
  %v6656 = vunpack.c.l.b16 %v649
  %v6657 = vunpack.c.l.b16 %v650
  %v6658 = vunpack.c.l.b16 %v651
  %v6659 = vunpack.c.l.b16 %v652
  %v6660 = vunpack.c.l.b16 %v653
  %v6661 = vunpack.c.l.b16 %v654
  %v6662 = vunpack.c.l.b16 %v655
  %v6663 = vunpack.c.l.b16 %v656
  %v6664 = vunpack.c.l.b16 %v657
  %v6665 = vunpack.c.l.b16 %v658
  %v6666 = vunpack.c.l.b16 %v659
  %v6667 = vunpack.c.l.b16 %v660
  %v6668 = vunpack.c.l.b16 %v661
  %v6669 = vunpack.c.l.b16 %v662
  %v6670 = vunpack.c.l.b16 %v663
  %v6671 = vunpack.c.l.b16 %v664
  %v6672 = vunpack.c.l.b16 %v665
  %v6673 = vunpack.c.l.b16 %v666
  %v6674 = vunpack.c.l.b16 %v667
  %v6675 = vunpack.c.l.b16 %v668
  %v6676 = vunpack.c.l.b16 %v669
  %v6677 = vunpack.c.l.b16 %v670
  %v6678 = vunpack.c.l.b16 %v671
  %v6679 = vunpack.c.l.b16 %v672
  %v6680 = vunpack.c.l.b16 %v673
  %v6681 = vunpack.c.l.b16 %v674
  %v6682 = vunpack.c.l.b16 %v675
  %v6683 = vunpack.c.l.b16 %v676
  %v6684 = vunpack.c.l.b16 %v677
  %v6685 = vunpack.c.l.b16 %v678
  %v6686 = vunpack.c.l.b16 %v679
  %v6687 = vunpack.c.l.b16 %v680
  %v6688 = vunpack.c.l.b16 %v681
  %v6689 = vunpack.c.l.b16 %v682
  %v6690 = vunpack.c.l.b16 %v683
  %v6691 = vunpack.c.l.b16 %v684
  %v6692 = vunpack.c.l.b16 %v685
  %v6693 = vunpack.c.l.b16 %v686
  %v6694 = vunpack.c.l.b16 %v687
  %v6695 = vunpack.c.l.b16 %v688
  %v6696 = vunpack.c.l.b16 %v689
  %v6697 = vunpack.c.l.b16 %v690
  %v6698 = vunpack.c.l.b16 %v691
  %v6699 = vunpack.c.l.b16 %v692
  %v6700 = vunpack.c.l.b16 %v693
  %v6701 = vunpack.c.l.b16 %v694
  %v6702 = vunpack.c.l.b16 %v695
  %v6703 = vunpack.c.l.b16 %v696
  %v6704 = vunpack.c.l.b16 %v697
  %v6705 = vunpack.c.l.b16 %v698
  %v6706 = vunpack.c.l.b16 %v699
  %v6707 = vunpack.c.l.b16 %v700
  %v6708 = vunpack.c.l.b16 %v701
  %v6709 = vunpack.c.l.b16 %v702
  %v6710 = vunpack.c.l.b16 %v703
  %v6711 = vunpack.c.l.b16 %v704
  %v6712 = vunpack.c.l.b16 %v705
  %v6713 = vunpack.c.l.b16 %v706
  %v6714 = vunpack.c.l.b16 %v707
  %v6715 = vunpack.c.l.b16 %v708
  %v6716 = vunpack.c.l.b16 %v709
  %v6717 = vunpack.c.l.b16 %v710
  %v6718 = vunpack.c.l.b16 %v711
  %v6719 = vunpack.c.l.b16 %v712
  %v6720 = vunpack.c.l.b16 %v713
  %v6721 = vunpack.c.l.b16 %v714
  %v6722 = vunpack.c.l.b16 %v715
  %v6723 = vunpack.c.l.b16 %v716
  %v6724 = vunpack.c.l.b16 %v717
  %v6725 = vunpack.c.l.b16 %v718
  %v6726 = vunpack.c.l.b16 %v719
  %v6727 = vunpack.c.l.b16 %v720
  %v6728 = vunpack.c.l.b16 %v721
  %v6729 = vunpack.c.l.b16 %v722
  %v6730 = vunpack.c.l.b16 %v723
  %v6731 = vunpack.c.l.b16 %v724
  %v6732 = vunpack.c.l.b16 %v725
  %v6733 = vunpack.c.l.b16 %v726
  %v6734 = vunpack.c.l.b16 %v727
  %v6735 = vunpack.c.l.b16 %v728
  %v6736 = vunpack.c.l.b16 %v729
  %v6737 = vunpack.c.l.b16 %v730
  %v6738 = vunpack.c.l.b16 %v731
  %v6739 = vunpack.c.l.b16 %v732
  %v6740 = vunpack.c.l.b16 %v733
  %v6741 = vunpack.c.l.b16 %v734
  %v6742 = vunpack.c.l.b16 %v735
  %v6743 = vunpack.c.l.b16 %v736
  %v6744 = vunpack.c.l.b16 %v737
  %v6745 = vunpack.c.l.b16 %v738
  %v6746 = vunpack.c.l.b16 %v739
  %v6747 = vunpack.c.l.b16 %v740
  %v6748 = vunpack.c.l.b16 %v741
  %v6749 = vunpack.c.l.b16 %v742
  %v6750 = vunpack.c.l.b16 %v743
  %v6751 = vunpack.c.l.b16 %v744
  %v6752 = vunpack.c.l.b16 %v745
  %v6753 = vunpack.c.l.b16 %v746
  %v6754 = vunpack.c.l.b16 %v747
  %v6755 = vunpack.c.l.b16 %v748
  %v6756 = vunpack.c.l.b16 %v749
  %v6757 = vunpack.c.l.b16 %v750
  %v6758 = vunpack.c.l.b16 %v751
  %v6759 = vunpack.c.l.b16 %v752
  %v6760 = vunpack.c.l.b16 %v753
  %v6761 = vunpack.c.l.b16 %v754
  %v6762 = vunpack.c.l.b16 %v755
  %v6763 = vunpack.c.l.b16 %v756
  %v6764 = vunpack.c.l.b16 %v757
  %v6765 = vunpack.c.l.b16 %v758
  %v6766 = vunpack.c.l.b16 %v759
  %v6767 = vunpack.c.l.b16 %v760
  %v6768 = vunpack.c.l.b16 %v761
  %v6769 = vunpack.c.l.b16 %v762
  %v6770 = vunpack.c.l.b16 %v763
  %v6771 = vunpack.c.l.b16 %v764
  %v6772 = vunpack.c.l.b16 %v765
  %v6773 = vunpack.c.l.b16 %v766
  %v6774 = vunpack.c.l.b16 %v767
  %v6775 = vunpack.c.l.b16 %v768
  %v6776 = vunpack.c.l.b16 %v769
  %v6777 = vunpack.c.l.b16 %v770
  %v6778 = vunpack.c.l.b16 %v771
  %v6779 = vunpack.c.l.b16 %v772
  %v6780 = vunpack.c.l.b16 %v773
  %v6781 = vunpack.c.l.b16 %v774
  %v6782 = vunpack.c.l.b16 %v775
  %v6783 = vunpack.c.l.b16 %v776
  %v6784 = vunpack.c.l.b16 %v777
  %v6785 = vunpack.c.l.b16 %v778
  %v6786 = vunpack.c.l.b16 %v779
  %v6787 = vunpack.c.l.b16 %v780
  %v6788 = vunpack.c.l.b16 %v781
  %v6789 = vunpack.c.l.b16 %v782
  %v6790 = vunpack.c.l.b16 %v783
  %v6791 = vunpack.c.l.b16 %v784
  %v6792 = vunpack.c.l.b16 %v785
  %v6793 = vunpack.c.l.b16 %v786
  %v6794 = vunpack.c.l.b16 %v787
  %v6795 = vunpack.c.l.b16 %v788
  %v6796 = vunpack.c.l.b16 %v789
  %v6797 = vunpack.c.l.b16 %v790
  %v6798 = vunpack.c.l.b16 %v791
  %v6799 = vunpack.c.l.b16 %v792
  %v6800 = vunpack.c.l.b16 %v793
  %v6801 = vunpack.c.l.b16 %v794
  %v6802 = vunpack.c.l.b16 %v795
  %v6803 = vunpack.c.l.b16 %v796
  %v6804 = vunpack.c.l.b16 %v797
  %v6805 = vunpack.c.l.b16 %v798
  %v6806 = vunpack.c.l.b16 %v799
  %v6807 = vunpack.c.l.b16 %v800
  %v6808 = vunpack.c.l.b16 %v801
  %v6809 = vunpack.c.l.b16 %v802
  %v6810 = vunpack.c.l.b16 %v803
  %v6811 = vunpack.c.l.b16 %v804
  %v6812 = vunpack.c.l.b16 %v805
  %v6813 = vunpack.c.l.b16 %v806
  %v6814 = vunpack.c.l.b16 %v807
  %v6815 = vunpack.c.l.b16 %v808
  %v6816 = vunpack.c.l.b16 %v809
  %v6817 = vunpack.c.l.b16 %v810
  %v6818 = vunpack.c.l.b16 %v811
  %v6819 = vunpack.c.l.b16 %v812
  %v6820 = vunpack.c.l.b16 %v813
  %v6821 = vunpack.c.l.b16 %v814
  %v6822 = vunpack.c.l.b16 %v815
  %v6823 = vunpack.c.l.b16 %v816
  %v6824 = vunpack.c.l.b16 %v817
  %v6825 = vunpack.c.l.b16 %v818
  %v6826 = vunpack.c.l.b16 %v819
  %v6827 = vunpack.c.l.b16 %v820
  %v6828 = vunpack.c.l.b16 %v821
  %v6829 = vunpack.c.l.b16 %v822
  %v6830 = vunpack.c.l.b16 %v823
  %v6831 = vunpack.c.l.b16 %v824
  %v6832 = vunpack.c.l.b16 %v825
  %v6833 = vunpack.c.l.b16 %v826
  %v6834 = vunpack.c.l.b16 %v827
  %v6835 = vunpack.c.l.b16 %v828
  %v6836 = vunpack.c.l.b16 %v829
  %v6837 = vunpack.c.l.b16 %v830
  %v6838 = vunpack.c.l.b16 %v831
  %v6839 = vunpack.c.l.b16 %v832
  %v6840 = vunpack.c.l.b16 %v833
  %v6841 = vunpack.c.l.b16 %v834
  %v6842 = vunpack.c.l.b16 %v835
  %v6843 = vunpack.c.l.b16 %v836
  %v6844 = vunpack.c.l.b16 %v837
  %v6845 = vunpack.c.l.b16 %v838
  %v6846 = vunpack.c.l.b16 %v839
  %v6847 = vunpack.c.l.b16 %v840
  %v6848 = vunpack.c.l.b16 %v841
  %v6849 = vunpack.c.l.b16 %v842
  %v6850 = vunpack.c.l.b16 %v843
  %v6851 = vunpack.c.l.b16 %v844
  %v6852 = vunpack.c.l.b16 %v845
  %v6853 = vunpack.c.l.b16 %v846
  %v6854 = vunpack.c.l.b16 %v847
  %v6855 = vunpack.c.l.b16 %v848
  %v6856 = vunpack.c.l.b16 %v849
  %v6857 = vunpack.c.l.b16 %v850
  %v6858 = vunpack.c.l.b16 %v851
  %v6859 = vunpack.c.l.b16 %v852
  %v6860 = vunpack.c.l.b16 %v853
  %v6861 = vunpack.c.l.b16 %v854
  %v6862 = vunpack.c.l.b16 %v855
  %v6863 = vunpack.c.l.b16 %v856
  %v6864 = vunpack.c.l.b16 %v857
  %v6865 = vunpack.c.l.b16 %v858
  %v6866 = vunpack.c.l.b16 %v859
  %v6867 = vunpack.c.l.b16 %v860
  %v6868 = vunpack.c.l.b16 %v861
  %v6869 = vunpack.c.l.b16 %v862
  %v6870 = vunpack.c.l.b16 %v863
  %v6871 = vunpack.c.l.b16 %v864
  %v6872 = vunpack.c.l.b16 %v865
  %v6873 = vunpack.c.l.b16 %v866
  %v6874 = vunpack.c.l.b16 %v867
  %v6875 = vunpack.c.l.b16 %v868
  %v6876 = vunpack.c.l.b16 %v869
  %v6877 = vunpack.c.l.b16 %v870
  %v6878 = vunpack.c.l.b16 %v871
  %v6879 = vunpack.c.l.b16 %v872
  %v6880 = vunpack.c.l.b16 %v873
  %v6881 = vunpack.c.l.b16 %v874
  %v6882 = vunpack.c.l.b16 %v875
  %v6883 = vunpack.c.l.b16 %v876
  %v6884 = vunpack.c.l.b16 %v877
  %v6885 = vunpack.c.l.b16 %v878
  %v6886 = vunpack.c.l.b16 %v879
  %v6887 = vunpack.c.l.b16 %v880
  %v6888 = vunpack.c.l.b16 %v881
  %v6889 = vunpack.c.l.b16 %v882
  %v6890 = vunpack.c.l.b16 %v883
  %v6891 = vunpack.c.l.b16 %v884
  %v6892 = vunpack.c.l.b16 %v885
  %v6893 = vunpack.c.l.b16 %v886
  %v6894 = vunpack.c.l.b16 %v887
  %v6895 = vunpack.c.l.b16 %v888
  %v6896 = vunpack.c.l.b16 %v889
  %v6897 = vunpack.c.l.b16 %v890
  %v6898 = vunpack.c.l.b16 %v891
  %v6899 = vunpack.c.l.b16 %v892
  %v6900 = vunpack.c.l.b16 %v893
  %v6901 = vunpack.c.l.b16 %v894
  %v6902 = vunpack.c.l.b16 %v895
  %v6903 = vunpack.c.l.b16 %v896
  %v6904 = vunpack.c.l.b16 %v897
  %v6905 = vunpack.c.l.b16 %v898
  %v6906 = vunpack.c.l.b16 %v899
  %v6907 = vunpack.c.l.b16 %v900
  %v6908 = vunpack.c.l.b16 %v901
  %v6909 = vunpack.c.l.b16 %v902
  %v6910 = vunpack.c.l.b16 %v903
  %v6911 = vunpack.c.l.b16 %v904
  %v6912 = vunpack.c.l.b16 %v905
  %v6913 = vunpack.c.l.b16 %v906
  %v6914 = vunpack.c.l.b16 %v907
  %v6915 = vunpack.c.l.b16 %v908
  %v6916 = vunpack.c.l.b16 %v909
  %v6917 = vunpack.c.l.b16 %v910
  %v6918 = vunpack.c.l.b16 %v911
  %v6919 = vunpack.c.l.b16 %v912
  %v6920 = vunpack.c.l.b16 %v913
  %v6921 = vunpack.c.l.b16 %v914
  %v6922 = vunpack.c.l.b16 %v915
  %v6923 = vunpack.c.l.b16 %v916
  %v6924 = vunpack.c.l.b16 %v917
  %v6925 = vunpack.c.l.b16 %v918
  %v6926 = vunpack.c.l.b16 %v919
  %v6927 = vunpack.c.l.b16 %v920
  %v6928 = vunpack.c.l.b16 %v921
  %v6929 = vunpack.c.l.b16 %v922
  %v6930 = vunpack.c.l.b16 %v923
  %v6931 = vunpack.c.l.b16 %v924
  %v6932 = vunpack.c.l.b16 %v925
  %v6933 = vunpack.c.l.b16 %v926
  %v6934 = vunpack.c.l.b16 %v927
  %v6935 = vunpack.c.l.b16 %v928
  %v6936 = vunpack.c.l.b16 %v929
  %v6937 = vunpack.c.l.b16 %v930
  %v6938 = vunpack.c.l.b16 %v931
  %v6939 = vunpack.c.l.b16 %v932
  %v6940 = vunpack.c.l.b16 %v933
  %v6941 = vunpack.c.l.b16 %v934
  %v6942 = vunpack.c.l.b16 %v935
  %v6943 = vunpack.c.l.b16 %v936
  %v6944 = vunpack.c.l.b16 %v937
  %v6945 = vunpack.c.l.b16 %v938
  %v6946 = vunpack.c.l.b16 %v939
  %v6947 = vunpack.c.l.b16 %v940
  %v6948 = vunpack.c.l.b16 %v941
  %v6949 = vunpack.c.l.b16 %v942
  %v6950 = vunpack.c.l.b16 %v943
  %v6951 = vunpack.c.l.b16 %v944
  %v6952 = vunpack.c.l.b16 %v945
  %v6953 = vunpack.c.l.b16 %v946
  %v6954 = vunpack.c.l.b16 %v947
  %v6955 = vunpack.c.l.b16 %v948
  %v6956 = vunpack.c.l.b16 %v949
  %v6957 = vunpack.c.l.b16 %v950
  %v6958 = vunpack.c.l.b16 %v951
  %v6959 = vunpack.c.l.b16 %v952
  %v6960 = vunpack.c.l.b16 %v953
  %v6961 = vunpack.c.l.b16 %v954
  %v6962 = vunpack.c.l.b16 %v955
  %v6963 = vunpack.c.l.b16 %v956
  %v6964 = vunpack.c.l.b16 %v957
  %v6965 = vunpack.c.l.b16 %v958
  %v6966 = vunpack.c.l.b16 %v959
  %v6967 = vunpack.c.l.b16 %v960
  %v6968 = vunpack.c.l.b16 %v961
  %v6969 = vunpack.c.l.b16 %v962
  %v6970 = vunpack.c.l.b16 %v963
  %v6971 = vunpack.c.l.b16 %v964
  %v6972 = vunpack.c.l.b16 %v965
  %v6973 = vunpack.c.l.b16 %v966
  %v6974 = vunpack.c.l.b16 %v967
  %v6975 = vunpack.c.l.b16 %v968
  %v6976 = vunpack.c.l.b16 %v969
  %v6977 = vunpack.c.l.b16 %v970
  %v6978 = vunpack.c.l.b16 %v971
  %v6979 = vunpack.c.l.b16 %v972
  %v6980 = vunpack.c.l.b16 %v973
  %v6981 = vunpack.c.l.b16 %v974
  %v6982 = vunpack.c.l.b16 %v975
  %v6983 = vunpack.c.l.b16 %v976
  %v6984 = vunpack.c.l.b16 %v977
  %v6985 = vunpack.c.l.b16 %v978
  %v6986 = vunpack.c.l.b16 %v979
  %v6987 = vunpack.c.l.b16 %v980
  %v6988 = vunpack.c.l.b16 %v981
  %v6989 = vunpack.c.l.b16 %v982
  %v6990 = vunpack.c.l.b16 %v983
  %v6991 = vunpack.c.l.b16 %v984
  %v6992 = vunpack.c.l.b16 %v985
  %v6993 = vunpack.c.l.b16 %v986
  %v6994 = vunpack.c.l.b16 %v987
  %v6995 = vunpack.c.l.b16 %v988
  %v6996 = vunpack.c.l.b16 %v989
  %v6997 = vunpack.c.l.b16 %v990
  %v6998 = vunpack.c.l.b16 %v991
  %v6999 = vunpack.c.l.b16 %v992
  %v7000 = vunpack.c.l.b16 %v993
  %v7001 = vunpack.c.l.b16 %v994
  %v7002 = vunpack.c.l.b16 %v995
  %v7003 = vunpack.c.l.b16 %v996
  %v7004 = vunpack.c.l.b16 %v997
  %v7005 = vunpack.c.l.b16 %v998
  %v7006 = vunpack.c.l.b16 %v999
  %v7007 = vunpack.c.l.b16 %v1000
  %v7008 = vunpack.c.l.b16 %v1001
  %v7009 = vunpack.c.l.b16 %v1002
  %v7010 = vunpack.c.l.b16 %v1003
  %v7011 = vunpack.c.l.b16 %v1004
  %v7012 = vunpack.c.l.b16 %v1005
  %v7013 = vunpack.c.l.b16 %v1006
  %v7014 = vunpack.c.l.b16 %v1007
  %v7015 = vunpack.c.l.b16 %v1008
  %v7016 = vunpack.c.l.b16 %v1009
  %v7017 = vunpack.c.l.b16 %v1010
  %v7018 = vunpack.c.l.b16 %v1011
  %v7019 = vunpack.c.l.b16 %v1012
  %v7020 = vunpack.c.l.b16 %v1013
  %v7021 = vunpack.c.l.b16 %v1014
  %v7022 = vunpack.c.l.b16 %v1015
  %v7023 = vunpack.c.l.b16 %v1016
  %v7024 = vunpack.c.l.b16 %v1017
  %v7025 = vunpack.c.l.b16 %v1018
  %v7026 = vunpack.c.l.b16 %v1019
  %v7027 = vunpack.c.l.b16 %v1020
  %v7028 = vunpack.c.l.b16 %v1021
  %v7029 = vunpack.c.l.b16 %v1022
  %v7030 = vunpack.c.l.b16 %v1023
  %v7031 = vunpack.c.l.b16 %v1024
  %v7032 = vunpack.c.l.b16 %v1025
  %v7033 = vunpack.c.l.b16 %v1026
  %v7034 = vunpack.c.l.b16 %v1027
  %v7035 = vunpack.c.l.b16 %v1028
  %v7036 = vunpack.c.l.b16 %v1029
  %v7037 = vunpack.c.l.b16 %v1030
  %v7038 = vunpack.c.l.b16 %v1031
  %v7039 = vunpack.c.l.b16 %v1032
  %v7040 = vunpack.c.l.b16 %v1033
  %v7041 = vunpack.c.l.b16 %v1034
  %v7042 = vunpack.c.l.b16 %v1035
  %v7043 = vunpack.c.l.b16 %v1036
  %v7044 = vunpack.c.l.b16 %v1037
  %v7045 = vunpack.c.l.b16 %v1038
  %v7046 = vunpack.c.l.b16 %v1039
  %v7047 = vunpack.c.l.b16 %v1040
  %v7048 = vunpack.c.l.b16 %v1041
  %v7049 = vunpack.c.l.b16 %v1042
  %v7050 = vunpack.c.l.b16 %v1043
  %v7051 = vunpack.c.l.b16 %v1044
  %v7052 = vunpack.c.l.b16 %v1045
  %v7053 = vunpack.c.l.b16 %v1046
  %v7054 = vunpack.c.l.b16 %v1047
  %v7055 = vunpack.c.l.b16 %v1048
  %v7056 = vunpack.c.l.b16 %v1049
  %v7057 = vunpack.c.l.b16 %v1050
  %v7058 = vunpack.c.l.b16 %v1051
  %v7059 = vunpack.c.l.b16 %v1052
  %v7060 = vunpack.c.l.b16 %v1053
  %v7061 = vunpack.c.l.b16 %v1054
  %v7062 = vunpack.c.l.b16 %v1055
  %v7063 = vunpack.c.l.b16 %v1056
  %v7064 = vunpack.c.l.b16 %v1057
  %v7065 = vunpack.c.l.b16 %v1058
  %v7066 = vunpack.c.l.b16 %v1059
  %v7067 = vunpack.c.l.b16 %v1060
  %v7068 = vunpack.c.l.b16 %v1061
  %v7069 = vunpack.c.l.b16 %v1062
  %v7070 = vunpack.c.l.b16 %v1063
  %v7071 = vunpack.c.l.b16 %v1064
  %v7072 = vunpack.c.l.b16 %v1065
  %v7073 = vunpack.c.l.b16 %v1066
  %v7074 = vunpack.c.l.b16 %v1067
  %v7075 = vunpack.c.l.b16 %v1068
  %v7076 = vunpack.c.l.b16 %v1069
  %v7077 = vunpack.c.l.b16 %v1070
  %v7078 = vunpack.c.l.b16 %v1071
  %v7079 = vunpack.c.l.b16 %v1072
  %v7080 = vunpack.c.l.b16 %v1073
  %v7081 = vunpack.c.l.b16 %v1074
  %v7082 = vunpack.c.l.b16 %v1075
  %v7083 = vunpack.c.l.b16 %v1076
  %v7084 = vunpack.c.l.b16 %v1077
  %v7085 = vunpack.c.l.b16 %v1078
  %v7086 = vunpack.c.l.b16 %v1079
  %v7087 = vunpack.c.l.b16 %v1080
  %v7088 = vunpack.c.l.b16 %v1081
  %v7089 = vunpack.c.l.b16 %v1082
  %v7090 = vunpack.c.l.b16 %v1083
  %v7091 = vunpack.c.l.b16 %v1084
  %v7092 = vunpack.c.l.b16 %v1085
  %v7093 = vunpack.c.l.b16 %v1086
  %v7094 = vunpack.c.l.b16 %v1087
  %v7095 = vunpack.c.l.b16 %v1088
  %v7096 = vunpack.c.l.b16 %v1089
  %v7097 = vunpack.c.l.b16 %v1090
  %v7098 = vunpack.c.l.b16 %v1091
  %v7099 = vunpack.c.l.b16 %v1092
  %v7100 = vunpack.c.l.b16 %v1093
  %v7101 = vunpack.c.l.b16 %v1094
  %v7102 = vunpack.c.l.b16 %v1095
  %v7103 = vunpack.c.l.b16 %v1096
  %v7104 = vunpack.c.l.b16 %v1097
  %v7105 = vunpack.c.l.b16 %v1098
  %v7106 = vunpack.c.l.b16 %v1099
  %v7107 = vunpack.c.l.b16 %v1100
  %v7108 = vunpack.c.l.b16 %v1101
  %v7109 = vunpack.c.l.b16 %v1102
  %v7110 = vunpack.c.l.b16 %v1103
  %v7111 = vunpack.c.l.b16 %v1104
  %v7112 = vunpack.c.l.b16 %v1105
  %v7113 = vunpack.c.l.b16 %v1106
  %v7114 = vunpack.c.l.b16 %v1107
  %v7115 = vunpack.c.l.b16 %v1108
  %v7116 = vunpack.c.l.b16 %v1109
  %v7117 = vunpack.c.l.b16 %v1110
  %v7118 = vunpack.c.l.b16 %v1111
  %v7119 = vunpack.c.l.b16 %v1112
  %v7120 = vunpack.c.l.b16 %v1113
  %v7121 = vunpack.c.l.b16 %v1114
  %v7122 = vunpack.c.l.b16 %v1115
  %v7123 = vunpack.c.l.b16 %v1116
  %v7124 = vunpack.c.l.b16 %v1117
  %v7125 = vunpack.c.l.b16 %v1118
  %v7126 = vunpack.c.l.b16 %v1119
  %v7127 = vunpack.c.l.b16 %v1120
  %v7128 = vunpack.c.l.b16 %v1121
  %v7129 = vunpack.c.l.b16 %v1122
  %v7130 = vunpack.c.l.b16 %v1123
  %v7131 = vunpack.c.l.b16 %v1124
  %v7132 = vunpack.c.l.b16 %v1125
  %v7133 = vunpack.c.l.b16 %v1126
  %v7134 = vunpack.c.l.b16 %v1127
  %v7135 = vunpack.c.l.b16 %v1128
  %v7136 = vunpack.c.l.b16 %v1129
  %v7137 = vunpack.c.l.b16 %v1130
  %v7138 = vunpack.c.l.b16 %v1131
  %v7139 = vunpack.c.l.b16 %v1132
  %v7140 = vunpack.c.l.b16 %v1133
  %v7141 = vunpack.c.l.b16 %v1134
  %v7142 = vunpack.c.l.b16 %v1135
  %v7143 = vunpack.c.l.b16 %v1136
  %v7144 = vunpack.c.l.b16 %v1137
  %v7145 = vunpack.c.l.b16 %v1138
  %v7146 = vunpack.c.l.b16 %v1139
  %v7147 = vunpack.c.l.b16 %v1140
  %v7148 = vunpack.c.l.b16 %v1141
  %v7149 = vunpack.c.l.b16 %v1142
  %v7150 = vunpack.c.l.b16 %v1143
  %v7151 = vunpack.c.l.b16 %v1144
  %v7152 = vunpack.c.l.b16 %v1145
  %v7153 = vunpack.c.l.b16 %v1146
  %v7154 = vunpack.c.l.b16 %v1147
  %v7155 = vunpack.c.l.b16 %v1148
  %v7156 = vunpack.c.l.b16 %v1149
  %v7157 = vunpack.c.l.b16 %v1150
  %v7158 = vunpack.c.l.b16 %v1151
  %v7159 = vunpack.c.l.b16 %v1152
  %v7160 = vunpack.c.l.b16 %v1153
  %v7161 = vunpack.c.l.b16 %v1154
  %v7162 = vunpack.c.l.b16 %v1155
  %v7163 = vunpack.c.l.b16 %v1156
  %v7164 = vunpack.c.l.b16 %v1157
  %v7165 = vunpack.c.l.b16 %v1158
  %v7166 = vunpack.c.l.b16 %v1159
  %v7167 = vunpack.c.l.b16 %v1160
  %v7168 = vunpack.c.l.b16 %v1161
  %v7169 = vunpack.c.l.b16 %v1162
  %v7170 = vunpack.c.l.b16 %v1163
  %v7171 = vunpack.c.l.b16 %v1164
  %v7172 = vunpack.c.l.b16 %v1165
  %v7173 = vunpack.c.l.b16 %v1166
  %v7174 = vunpack.c.l.b16 %v1167
  %v7175 = vunpack.c.l.b16 %v1168
  %v7176 = vunpack.c.l.b16 %v1169
  %v7177 = vunpack.c.l.b16 %v1170
  %v7178 = vunpack.c.l.b16 %v1171
  %v7179 = vunpack.c.l.b16 %v1172
  %v7180 = vunpack.c.l.b16 %v1173
  %v7181 = vunpack.c.l.b16 %v1174
  %v7182 = vunpack.c.l.b16 %v1175
  %v7183 = vunpack.c.l.b16 %v1176
  %v7184 = vunpack.c.l.b16 %v1177
  %v7185 = vunpack.c.l.b16 %v1178
  %v7186 = vunpack.c.l.b16 %v1179
  %v7187 = vunpack.c.l.b16 %v1180
  %v7188 = vunpack.c.l.b16 %v1181
  %v7189 = vunpack.c.l.b16 %v1182
  %v7190 = vunpack.c.l.b16 %v1183
  %v7191 = vunpack.c.l.b16 %v1184
  %v7192 = vunpack.c.l.b16 %v1185
  %v7193 = vunpack.c.l.b16 %v1186
  %v7194 = vunpack.c.l.b16 %v1187
  %v7195 = vunpack.c.l.b16 %v1188
  %v7196 = vunpack.c.l.b16 %v1189
  %v7197 = vunpack.c.l.b16 %v1190
  %v7198 = vunpack.c.l.b16 %v1191
  %v7199 = vunpack.c.l.b16 %v1192
  %v7200 = vunpack.c.l.b16 %v1193
  %v7201 = vunpack.c.l.b16 %v1194
  %v7202 = vunpack.c.l.b16 %v1195
  %v7203 = vunpack.c.l.b16 %v1196
  %v7204 = vunpack.c.l.b16 %v1197
  %v7205 = vunpack.c.l.b16 %v1198
  %v7206 = vunpack.c.l.b16 %v1199
  %v7207 = vunpack.c.l.b16 %v1200
  %v7208 = vunpack.c.l.b16 %v1201
  %v7209 = vunpack.c.l.b16 %v1202
  %v7210 = vunpack.c.l.b16 %v1203
  %v7211 = vunpack.c.l.b16 %v1204
  %v7212 = vunpack.c.l.b16 %v1205
  %v7213 = vunpack.c.l.b16 %v1206
  %v7214 = vunpack.c.l.b16 %v1207
  %v7215 = vunpack.c.l.b16 %v1208
  %v7216 = vunpack.c.l.b16 %v1209
  %v7217 = vunpack.c.l.b16 %v1210
  %v7218 = vunpack.c.l.b16 %v1211
  %v7219 = vunpack.c.l.b16 %v1212
  %v7220 = vunpack.c.l.b16 %v1213
  %v7221 = vunpack.c.l.b16 %v1214
  %v7222 = vunpack.c.l.b16 %v1215
  %v7223 = vunpack.c.l.b16 %v1216
  %v7224 = vunpack.c.l.b16 %v1217
  %v7225 = vunpack.c.l.b16 %v1218
  %v7226 = vunpack.c.l.b16 %v1219
  %v7227 = vunpack.c.l.b16 %v1220
  %v7228 = vunpack.c.l.b16 %v1221
  %v7229 = vunpack.c.l.b16 %v1222
  %v7230 = vunpack.c.l.b16 %v1223
  %v7231 = vunpack.c.l.b16 %v1224
  %v7232 = vunpack.c.l.b16 %v1225
  %v7233 = vunpack.c.l.b16 %v1226
  %v7234 = vunpack.c.l.b16 %v1227
  %v7235 = vunpack.c.l.b16 %v1228
  %v7236 = vunpack.c.l.b16 %v1229
  %v7237 = vunpack.c.l.b16 %v1230
  %v7238 = vunpack.c.l.b16 %v1231
  %v7239 = vunpack.c.l.b16 %v1232
  %v7240 = vunpack.c.l.b16 %v1233
  %v7241 = vunpack.c.l.b16 %v1234
  %v7242 = vunpack.c.l.b16 %v1235
  %v7243 = vunpack.c.l.b16 %v1236
  %v7244 = vunpack.c.l.b16 %v1237
  %v7245 = vunpack.c.l.b16 %v1238
  %v7246 = vunpack.c.l.b16 %v1239
  %v7247 = vunpack.c.l.b16 %v1240
  %v7248 = vunpack.c.l.b16 %v1241
  %v7249 = vunpack.c.l.b16 %v1242
  %v7250 = vunpack.c.l.b16 %v1243
  %v7251 = vunpack.c.l.b16 %v1244
  %v7252 = vunpack.c.l.b16 %v1245
  %v7253 = vunpack.c.l.b16 %v1246
  %v7254 = vunpack.c.l.b16 %v1247
  %v7255 = vunpack.c.l.b16 %v1248
  %v7256 = vunpack.c.l.b16 %v1249
  %v7257 = vunpack.c.l.b16 %v1250
  %v7258 = vunpack.c.l.b16 %v1251
  %v7259 = vunpack.c.l.b16 %v1252
  %v7260 = vunpack.c.l.b16 %v1253
  %v7261 = vunpack.c.l.b16 %v1254
  %v7262 = vunpack.c.l.b16 %v1255
  %v7263 = vunpack.c.l.b16 %v1256
  %v7264 = vunpack.c.l.b16 %v1257
  %v7265 = vunpack.c.l.b16 %v1258
  %v7266 = vunpack.c.l.b16 %v1259
  %v7267 = vunpack.c.l.b16 %v1260
  %v7268 = vunpack.c.l.b16 %v1261
  %v7269 = vunpack.c.l.b16 %v1262
  %v7270 = vunpack.c.l.b16 %v1263
  %v7271 = vunpack.c.l.b16 %v1264
  %v7272 = vunpack.c.l.b16 %v1265
  %v7273 = vunpack.c.l.b16 %v1266
  %v7274 = vunpack.c.l.b16 %v1267
  %v7275 = vunpack.c.l.b16 %v1268
  %v7276 = vunpack.c.l.b16 %v1269
  %v7277 = vunpack.c.l.b16 %v1270
  %v7278 = vunpack.c.l.b16 %v1271
  %v7279 = vunpack.c.l.b16 %v1272
  %v7280 = vunpack.c.l.b16 %v1273
  %v7281 = vunpack.c.l.b16 %v1274
  %v7282 = vunpack.c.l.b16 %v1275
  %v7283 = vunpack.c.l.b16 %v1276
  %v7284 = vunpack.c.l.b16 %v1277
  %v7285 = vunpack.c.l.b16 %v1278
  %v7286 = vunpack.c.l.b16 %v1279
  %v7287 = vunpack.c.l.b16 %v1280
  %v7288 = vunpack.c.l.b16 %v1281
  %v7289 = vunpack.c.l.b16 %v1282
  %v7290 = vunpack.c.l.b16 %v1283
  %v7291 = vunpack.c.l.b16 %v1284
  %v7292 = vunpack.c.l.b16 %v1285
  %v7293 = vunpack.c.l.b16 %v1286
  %v7294 = vunpack.c.l.b16 %v1287
  %v7295 = vunpack.c.l.b16 %v1288
  %v7296 = vunpack.c.l.b16 %v1289
  %v7297 = vunpack.c.l.b16 %v1290
  %v7298 = vunpack.c.l.b16 %v1291
  %v7299 = vunpack.c.l.b16 %v1292
  %v7300 = vunpack.c.l.b16 %v1293
  %v7301 = vunpack.c.l.b16 %v1294
  %v7302 = vunpack.c.l.b16 %v1295
  %v7303 = vunpack.c.l.b16 %v1296
  %v7304 = vunpack.c.l.b16 %v1297
  %v7305 = vunpack.c.l.b16 %v1298
  %v7306 = vunpack.c.l.b16 %v1299
  %v7307 = vunpack.c.l.b16 %v1300
  %v7308 = vunpack.c.l.b16 %v1301
  %v7309 = vunpack.c.l.b16 %v1302
  %v7310 = vunpack.c.l.b16 %v1303
  %v7311 = vunpack.c.l.b16 %v1304
  %v7312 = vunpack.c.l.b16 %v1305
  %v7313 = vunpack.c.l.b16 %v1306
  %v7314 = vunpack.c.l.b16 %v1307
  %v7315 = vunpack.c.l.b16 %v1308
  %v7316 = vunpack.c.l.b16 %v1309
  %v7317 = vunpack.c.l.b16 %v1310
  %v7318 = vunpack.c.l.b16 %v1311
  %v7319 = vunpack.c.l.b16 %v1312
  %v7320 = vunpack.c.l.b16 %v1313
  %v7321 = vunpack.c.l.b16 %v1314
  %v7322 = vunpack.c.l.b16 %v1315
  %v7323 = vunpack.c.l.b16 %v1316
  %v7324 = vunpack.c.l.b16 %v1317
  %v7325 = vunpack.c.l.b16 %v1318
  %v7326 = vunpack.c.l.b16 %v1319
  %v7327 = vunpack.c.l.b16 %v1320
  %v7328 = vunpack.c.l.b16 %v1321
  %v7329 = vunpack.c.l.b16 %v1322
  %v7330 = vunpack.c.l.b16 %v1323
  %v7331 = vunpack.c.l.b16 %v1324
  %v7332 = vunpack.c.l.b16 %v1325
  %v7333 = vunpack.c.l.b16 %v1326
  %v7334 = vunpack.c.l.b16 %v1327
  %v7335 = vunpack.c.l.b16 %v1328
  %v7336 = vunpack.c.l.b16 %v1329
  %v7337 = vunpack.c.l.b16 %v1330
  %v7338 = vunpack.c.l.b16 %v1331
  %v7339 = vunpack.c.l.b16 %v1332
  %v7340 = vunpack.c.l.b16 %v1333
  %v7341 = vunpack.c.l.b16 %v1334
  %v7342 = vunpack.c.l.b16 %v1335
  %v7343 = vunpack.c.l.b16 %v1336
  %v7344 = vunpack.c.l.b16 %v1337
  %v7345 = vunpack.c.l.b16 %v1338
  %v7346 = vunpack.c.l.b16 %v1339
  %v7347 = vunpack.c.l.b16 %v1340
  %v7348 = vunpack.c.l.b16 %v1341
  %v7349 = vunpack.c.l.b16 %v1342
  %v7350 = vunpack.c.l.b16 %v1343
  %v7351 = vunpack.c.l.b16 %v1344
  %v7352 = vunpack.c.l.b16 %v1345
  %v7353 = vunpack.c.l.b16 %v1346
  %v7354 = vunpack.c.l.b16 %v1347
  %v7355 = vunpack.c.l.b16 %v1348
  %v7356 = vunpack.c.l.b16 %v1349
  %v7357 = vunpack.c.l.b16 %v1350
  %v7358 = vunpack.c.l.b16 %v1351
  %v7359 = vunpack.c.l.b16 %v1352
  %v7360 = vunpack.c.l.b16 %v1353
  %v7361 = vunpack.c.l.b16 %v1354
  %v7362 = vunpack.c.l.b16 %v1355
  %v7363 = vunpack.c.l.b16 %v1356
  %v7364 = vunpack.c.l.b16 %v1357
  %v7365 = vunpack.c.l.b16 %v1358
  %v7366 = vunpack.c.l.b16 %v1359
  %v7367 = vunpack.c.l.b16 %v1360
  %v7368 = vunpack.c.l.b16 %v1361
  %v7369 = vunpack.c.l.b16 %v1362
  %v7370 = vunpack.c.l.b16 %v1363
  %v7371 = vunpack.c.l.b16 %v1364
  %v7372 = vunpack.c.l.b16 %v1365
  %v7373 = vunpack.c.l.b16 %v1366
  %v7374 = vunpack.c.l.b16 %v1367
  %v7375 = vunpack.c.l.b16 %v1368
  %v7376 = vunpack.c.l.b16 %v1369
  %v7377 = vunpack.c.l.b16 %v1370
  %v7378 = vunpack.c.l.b16 %v1371
  %v7379 = vunpack.c.l.b16 %v1372
  %v7380 = vunpack.c.l.b16 %v1373
  %v7381 = vunpack.c.l.b16 %v1374
  %v7382 = vunpack.c.l.b16 %v1375
  %v7383 = vunpack.c.l.b16 %v1376
  %v7384 = vunpack.c.l.b16 %v1377
  %v7385 = vunpack.c.l.b16 %v1378
  %v7386 = vunpack.c.l.b16 %v1379
  %v7387 = vunpack.c.l.b16 %v1380
  %v7388 = vunpack.c.l.b16 %v1381
  %v7389 = vunpack.c.l.b16 %v1382
  %v7390 = vunpack.c.l.b16 %v1383
  %v7391 = vunpack.c.l.b16 %v1384
  %v7392 = vunpack.c.l.b16 %v1385
  %v7393 = vunpack.c.l.b16 %v1386
  %v7394 = vunpack.c.l.b16 %v1387
  %v7395 = vunpack.c.l.b16 %v1388
  %v7396 = vunpack.c.l.b16 %v1389
  %v7397 = vunpack.c.l.b16 %v1390
  %v7398 = vunpack.c.l.b16 %v1391
  %v7399 = vunpack.c.l.b16 %v1392
  %v7400 = vunpack.c.l.b16 %v1393
  %v7401 = vunpack.c.l.b16 %v1394
  %v7402 = vunpack.c.l.b16 %v1395
  %v7403 = vunpack.c.l.b16 %v1396
  %v7404 = vunpack.c.l.b16 %v1397
  %v7405 = vunpack.c.l.b16 %v1398
  %v7406 = vunpack.c.l.b16 %v1399
  %v7407 = vunpack.c.l.b16 %v1400
  %v7408 = vunpack.c.l.b16 %v1401
  %v7409 = vunpack.c.l.b16 %v1402
  %v7410 = vunpack.c.l.b16 %v1403
  %v7411 = vunpack.c.l.b16 %v1404
  %v7412 = vunpack.c.l.b16 %v1405
  %v7413 = vunpack.c.l.b16 %v1406
  %v7414 = vunpack.c.l.b16 %v1407
  %v7415 = vunpack.c.l.b16 %v1408
  %v7416 = vunpack.c.l.b16 %v1409
  %v7417 = vunpack.c.l.b16 %v1410
  %v7418 = vunpack.c.l.b16 %v1411
  %v7419 = vunpack.c.l.b16 %v1412
  %v7420 = vunpack.c.l.b16 %v1413
  %v7421 = vunpack.c.l.b16 %v1414
  %v7422 = vunpack.c.l.b16 %v1415
  %v7423 = vunpack.c.l.b16 %v1416
  %v7424 = vunpack.c.l.b16 %v1417
  %v7425 = vunpack.c.l.b16 %v1418
  %v7426 = vunpack.c.l.b16 %v1419
  %v7427 = vunpack.c.l.b16 %v1420
  %v7428 = vunpack.c.l.b16 %v1421
  %v7429 = vunpack.c.l.b16 %v1422
  %v7430 = vunpack.c.l.b16 %v1423
  %v7431 = vunpack.c.l.b16 %v1424
  %v7432 = vunpack.c.l.b16 %v1425
  %v7433 = vunpack.c.l.b16 %v1426
  %v7434 = vunpack.c.l.b16 %v1427
  %v7435 = vunpack.c.l.b16 %v1428
  %v7436 = vunpack.c.l.b16 %v1429
  %v7437 = vunpack.c.l.b16 %v1430
  %v7438 = vunpack.c.l.b16 %v1431
  %v7439 = vunpack.c.l.b16 %v1432
  %v7440 = vunpack.c.l.b16 %v1433
  %v7441 = vunpack.c.l.b16 %v1434
  %v7442 = vunpack.c.l.b16 %v1435
  %v7443 = vunpack.c.l.b16 %v1436
  %v7444 = vunpack.c.l.b16 %v1437
  %v7445 = vunpack.c.l.b16 %v1438
  %v7446 = vunpack.c.l.b16 %v1439
  %v7447 = vunpack.c.l.b16 %v1440
  %v7448 = vunpack.c.l.b16 %v1441
  %v7449 = vunpack.c.l.b16 %v1442
  %v7450 = vunpack.c.l.b16 %v1443
  %v7451 = vunpack.c.l.b16 %v1444
  %v7452 = vunpack.c.l.b16 %v1445
  %v7453 = vunpack.c.l.b16 %v1446
  %v7454 = vunpack.c.l.b16 %v1447
  %v7455 = vunpack.c.l.b16 %v1448
  %v7456 = vunpack.c.l.b16 %v1449
  %v7457 = vunpack.c.l.b16 %v1450
  %v7458 = vunpack.c.l.b16 %v1451
  %v7459 = vunpack.c.l.b16 %v1452
  %v7460 = vunpack.c.l.b16 %v1453
  %v7461 = vunpack.c.l.b16 %v1454
  %v7462 = vunpack.c.l.b16 %v1455
  %v7463 = vunpack.c.l.b16 %v1456
  %v7464 = vunpack.c.l.b16 %v1457
  %v7465 = vunpack.c.l.b16 %v1458
  %v7466 = vunpack.c.l.b16 %v1459
  %v7467 = vunpack.c.l.b16 %v1460
  %v7468 = vunpack.c.l.b16 %v1461
  %v7469 = vunpack.c.l.b16 %v1462
  %v7470 = vunpack.c.l.b16 %v1463
  %v7471 = vunpack.c.l.b16 %v1464
  %v7472 = vunpack.c.l.b16 %v1465
  %v7473 = vunpack.c.l.b16 %v1466
  %v7474 = vunpack.c.l.b16 %v1467
  %v7475 = vunpack.c.l.b16 %v1468
  %v7476 = vunpack.c.l.b16 %v1469
  %v7477 = vunpack.c.l.b16 %v1470
  %v7478 = vunpack.c.l.b16 %v1471
  %v7479 = vunpack.c.l.b16 %v1472
  %v7480 = vunpack.c.l.b16 %v1473
  %v7481 = vunpack.c.l.b16 %v1474
  %v7482 = vunpack.c.l.b16 %v1475
  %v7483 = vunpack.c.l.b16 %v1476
  %v7484 = vunpack.c.l.b16 %v1477
  %v7485 = vunpack.c.l.b16 %v1478
  %v7486 = vunpack.c.l.b16 %v1479
  %v7487 = vunpack.c.l.b16 %v1480
  %v7488 = vunpack.c.l.b16 %v1481
  %v7489 = vunpack.c.l.b16 %v1482
  %v7490 = vunpack.c.l.b16 %v1483
  %v7491 = vunpack.c.l.b16 %v1484
  %v7492 = vunpack.c.l.b16 %v1485
  %v7493 = vunpack.c.l.b16 %v1486
  %v7494 = vunpack.c.l.b16 %v1487
  %v7495 = vunpack.c.l.b16 %v1488
  %v7496 = vunpack.c.l.b16 %v1489
  %v7497 = vunpack.c.l.b16 %v1490
  %v7498 = vunpack.c.l.b16 %v1491
  %v7499 = vunpack.c.l.b16 %v1492
  %v7500 = vunpack.c.l.b16 %v1493
  %v7501 = vunpack.c.l.b16 %v1494
  %v7502 = vunpack.c.l.b16 %v1495
  %v7503 = vunpack.c.l.b16 %v1496
  %v7504 = vunpack.c.l.b16 %v1497
  %v7505 = vunpack.c.l.b16 %v1498
  %v7506 = vunpack.c.l.b16 %v1499
  %v7507 = vunpack.c.l.b16 %v1500
  %v7508 = vunpack.c.l.b16 %v1501
  %v7509 = vunpack.c.l.b16 %v1502
  %v7510 = vunpack.c.l.b16 %v1503
  %v7511 = vunpack.c.l.b16 %v1504
  %v7512 = vunpack.c.l.b16 %v1505
  %v7513 = vunpack.c.l.b16 %v1506
  %v7514 = vunpack.c.l.b16 %v1507
  %v7515 = vunpack.c.l.b16 %v1508
  %v7516 = vunpack.c.l.b16 %v1509
  %v7517 = vunpack.c.l.b16 %v1510
  %v7518 = vunpack.c.l.b16 %v1511
  %v7519 = vunpack.c.l.b16 %v1512
  %v7520 = vunpack.c.l.b16 %v1513
  %v7521 = vunpack.c.l.b16 %v1514
  %v7522 = vunpack.c.l.b16 %v1515
  %v7523 = vunpack.c.l.b16 %v1516
  %v7524 = vunpack.c.l.b16 %v1517
  %v7525 = vunpack.c.l.b16 %v1518
  %v7526 = vunpack.c.l.b16 %v1519
  %v7527 = vunpack.c.l.b16 %v1520
  %v7528 = vunpack.c.l.b16 %v1521
  %v7529 = vunpack.c.l.b16 %v1522
  %v7530 = vunpack.c.l.b16 %v1523
  %v7531 = vunpack.c.l.b16 %v1524
  %v7532 = vunpack.c.l.b16 %v1525
  %v7533 = vunpack.c.l.b16 %v1526
  %v7534 = vunpack.c.l.b16 %v1527
  %v7535 = vunpack.c.l.b16 %v1528
  %v7536 = vunpack.c.l.b16 %v1529
  %v7537 = vunpack.c.l.b16 %v1530
  %v7538 = vunpack.c.l.b16 %v1531
  %v7539 = vunpack.c.l.b16 %v1532
  %v7540 = vunpack.c.l.b16 %v1533
  %v7541 = vunpack.c.l.b16 %v1534
  %v7542 = vunpack.c.l.b16 %v1535
  %v7543 = vunpack.c.l.b16 %v1536
  %v7544 = vunpack.c.l.b16 %v1537
  %v7545 = vunpack.c.l.b16 %v1538
  %v7546 = vunpack.c.l.b16 %v1539
  %v7547 = vunpack.c.l.b16 %v1540
  %v7548 = vunpack.c.l.b16 %v1541
  %v7549 = vunpack.c.l.b16 %v1542
  %v7550 = vunpack.c.l.b16 %v1543
  %v7551 = vunpack.c.l.b16 %v1544
  %v7552 = vunpack.c.l.b16 %v1545
  %v7553 = vunpack.c.l.b16 %v1546
  %v7554 = vunpack.c.l.b16 %v1547
  %v7555 = vunpack.c.l.b16 %v1548
  %v7556 = vunpack.c.l.b16 %v1549
  %v7557 = vunpack.c.l.b16 %v1550
  %v7558 = vunpack.c.l.b16 %v1551
  %v7559 = vunpack.c.l.b16 %v1552
  %v7560 = vunpack.c.l.b16 %v1553
  %v7561 = vunpack.c.l.b16 %v1554
  %v7562 = vunpack.c.l.b16 %v1555
  %v7563 = vunpack.c.l.b16 %v1556
  %v7564 = vunpack.c.l.b16 %v1557
  %v7565 = vunpack.c.l.b16 %v1558
  %v7566 = vunpack.c.l.b16 %v1559
  %v7567 = vunpack.c.l.b16 %v1560
  %v7568 = vunpack.c.l.b16 %v1561
  %v7569 = vunpack.c.l.b16 %v1562
  %v7570 = vunpack.c.l.b16 %v1563
  %v7571 = vunpack.c.l.b16 %v1564
  %v7572 = vunpack.c.l.b16 %v1565
  %v7573 = vunpack.c.l.b16 %v1566
  %v7574 = vunpack.c.l.b16 %v1567
  %v7575 = vunpack.c.l.b16 %v1568
  %v7576 = vunpack.c.l.b16 %v1569
  %v7577 = vunpack.c.l.b16 %v1570
  %v7578 = vunpack.c.l.b16 %v1571
  %v7579 = vunpack.c.l.b16 %v1572
  %v7580 = vunpack.c.l.b16 %v1573
  %v7581 = vunpack.c.l.b16 %v1574
  %v7582 = vunpack.c.l.b16 %v1575
  %v7583 = vunpack.c.l.b16 %v1576
  %v7584 = vunpack.c.l.b16 %v1577
  %v7585 = vunpack.c.l.b16 %v1578
  %v7586 = vunpack.c.l.b16 %v1579
  %v7587 = vunpack.c.l.b16 %v1580
  %v7588 = vunpack.c.l.b16 %v1581
  %v7589 = vunpack.c.l.b16 %v1582
  %v7590 = vunpack.c.l.b16 %v1583
  %v7591 = vunpack.c.l.b16 %v1584
  %v7592 = vunpack.c.l.b16 %v1585
  %v7593 = vunpack.c.l.b16 %v1586
  %v7594 = vunpack.c.l.b16 %v1587
  %v7595 = vunpack.c.l.b16 %v1588
  %v7596 = vunpack.c.l.b16 %v1589
  %v7597 = vunpack.c.l.b16 %v1590
  %v7598 = vunpack.c.l.b16 %v1591
  %v7599 = vunpack.c.l.b16 %v1592
  %v7600 = vunpack.c.l.b16 %v1593
  %v7601 = vunpack.c.l.b16 %v1594
  %v7602 = vunpack.c.l.b16 %v1595
  %v7603 = vunpack.c.l.b16 %v1596
  %v7604 = vunpack.c.l.b16 %v1597
  %v7605 = vunpack.c.l.b16 %v1598
  %v7606 = vunpack.c.l.b16 %v1599
  %v7607 = vunpack.c.l.b16 %v1600
  %v7608 = vunpack.c.l.b16 %v1601
  %v7609 = vunpack.c.l.b16 %v1602
  %v7610 = vunpack.c.l.b16 %v1603
  %v7611 = vunpack.c.l.b16 %v1604
  %v7612 = vunpack.c.l.b16 %v1605
  %v7613 = vunpack.c.l.b16 %v1606
  %v7614 = vunpack.c.l.b16 %v1607
  %v7615 = vunpack.c.l.b16 %v1608
  %v7616 = vunpack.c.l.b16 %v1609
  %v7617 = vunpack.c.l.b16 %v1610
  %v7618 = vunpack.c.l.b16 %v1611
  %v7619 = vunpack.c.l.b16 %v1612
  %v7620 = vunpack.c.l.b16 %v1613
  %v7621 = vunpack.c.l.b16 %v1614
  %v7622 = vunpack.c.l.b16 %v1615
  %v7623 = vunpack.c.l.b16 %v1616
  %v7624 = vunpack.c.l.b16 %v1617
  %v7625 = vunpack.c.l.b16 %v1618
  %v7626 = vunpack.c.l.b16 %v1619
  %v7627 = vunpack.c.l.b16 %v1620
  %v7628 = vunpack.c.l.b16 %v1621
  %v7629 = vunpack.c.l.b16 %v1622
  %v7630 = vunpack.c.l.b16 %v1623
  %v7631 = vunpack.c.l.b16 %v1624
  %v7632 = vunpack.c.l.b16 %v1625
  %v7633 = vunpack.c.l.b16 %v1626
  %v7634 = vunpack.c.l.b16 %v1627
  %v7635 = vunpack.c.l.b16 %v1628
  %v7636 = vunpack.c.l.b16 %v1629
  %v7637 = vunpack.c.l.b16 %v1630
  %v7638 = vunpack.c.l.b16 %v1631
  %v7639 = vunpack.c.l.b16 %v1632
  %v7640 = vunpack.c.l.b16 %v1633
  %v7641 = vunpack.c.l.b16 %v1634
  %v7642 = vunpack.c.l.b16 %v1635
  %v7643 = vunpack.c.l.b16 %v1636
  %v7644 = vunpack.c.l.b16 %v1637
  %v7645 = vunpack.c.l.b16 %v1638
  %v7646 = vunpack.c.l.b16 %v1639
  %v7647 = vunpack.c.l.b16 %v1640
  %v7648 = vunpack.c.l.b16 %v1641
  %v7649 = vunpack.c.l.b16 %v1642
  %v7650 = vunpack.c.l.b16 %v1643
  %v7651 = vunpack.c.l.b16 %v1644
  %v7652 = vunpack.c.l.b16 %v1645
  %v7653 = vunpack.c.l.b16 %v1646
  %v7654 = vunpack.c.l.b16 %v1647
  %v7655 = vunpack.c.l.b16 %v1648
  %v7656 = vunpack.c.l.b16 %v1649
  %v7657 = vunpack.c.l.b16 %v1650
  %v7658 = vunpack.c.l.b16 %v1651
  %v7659 = vunpack.c.l.b16 %v1652
  %v7660 = vunpack.c.l.b16 %v1653
  %v7661 = vunpack.c.l.b16 %v1654
  %v7662 = vunpack.c.l.b16 %v1655
  %v7663 = vunpack.c.l.b16 %v1656
  %v7664 = vunpack.c.l.b16 %v1657
  %v7665 = vunpack.c.l.b16 %v1658
  %v7666 = vunpack.c.l.b16 %v1659
  %v7667 = vunpack.c.l.b16 %v1660
  %v7668 = vunpack.c.l.b16 %v1661
  %v7669 = vunpack.c.l.b16 %v1662
  %v7670 = vunpack.c.l.b16 %v1663
  %v7671 = vunpack.c.l.b16 %v1664
  %v7672 = vunpack.c.l.b16 %v1665
  %v7673 = vunpack.c.l.b16 %v1666
  %v7674 = vunpack.c.l.b16 %v1667
  %v7675 = vunpack.c.l.b16 %v1668
  %v7676 = vunpack.c.l.b16 %v1669
  %v7677 = vunpack.c.l.b16 %v1670
  %v7678 = vunpack.c.l.b16 %v1671
  %v7679 = vunpack.c.l.b16 %v1672
  %v7680 = vunpack.c.l.b16 %v1673
  %v7681 = vunpack.c.l.b16 %v1674
  %v7682 = vunpack.c.l.b16 %v1675
  %v7683 = vunpack.c.l.b16 %v1676
  %v7684 = vunpack.c.l.b16 %v1677
  %v7685 = vunpack.c.l.b16 %v1678
  %v7686 = vunpack.c.l.b16 %v1679
  %v7687 = vunpack.c.l.b16 %v1680
  %v7688 = vunpack.c.l.b16 %v1681
  %v7689 = vunpack.c.l.b16 %v1682
  %v7690 = vunpack.c.l.b16 %v1683
  %v7691 = vunpack.c.l.b16 %v1684
  %v7692 = vunpack.c.l.b16 %v1685
  %v7693 = vunpack.c.l.b16 %v1686
  %v7694 = vunpack.c.l.b16 %v1687
  %v7695 = vunpack.c.l.b16 %v1688
  %v7696 = vunpack.c.l.b16 %v1689
  %v7697 = vunpack.c.l.b16 %v1690
  %v7698 = vunpack.c.l.b16 %v1691
  %v7699 = vunpack.c.l.b16 %v1692
  %v7700 = vunpack.c.l.b16 %v1693
  %v7701 = vunpack.c.l.b16 %v1694
  %v7702 = vunpack.c.l.b16 %v1695
  %v7703 = vunpack.c.l.b16 %v1696
  %v7704 = vunpack.c.l.b16 %v1697
  %v7705 = vunpack.c.l.b16 %v1698
  %v7706 = vunpack.c.l.b16 %v1699
  %v7707 = vunpack.c.l.b16 %v1700
  %v7708 = vunpack.c.l.b16 %v1701
  %v7709 = vunpack.c.l.b16 %v1702
  %v7710 = vunpack.c.l.b16 %v1703
  %v7711 = vunpack.c.l.b16 %v1704
  %v7712 = vunpack.c.l.b16 %v1705
  %v7713 = vunpack.c.l.b16 %v1706
  %v7714 = vunpack.c.l.b16 %v1707
  %v7715 = vunpack.c.l.b16 %v1708
  %v7716 = vunpack.c.l.b16 %v1709
  %v7717 = vunpack.c.l.b16 %v1710
  %v7718 = vunpack.c.l.b16 %v1711
  %v7719 = vunpack.c.l.b16 %v1712
  %v7720 = vunpack.c.l.b16 %v1713
  %v7721 = vunpack.c.l.b16 %v1714
  %v7722 = vunpack.c.l.b16 %v1715
  %v7723 = vunpack.c.l.b16 %v1716
  %v7724 = vunpack.c.l.b16 %v1717
  %v7725 = vunpack.c.l.b16 %v1718
  %v7726 = vunpack.c.l.b16 %v1719
  %v7727 = vunpack.c.l.b16 %v1720
  %v7728 = vunpack.c.l.b16 %v1721
  %v7729 = vunpack.c.l.b16 %v1722
  %v7730 = vunpack.c.l.b16 %v1723
  %v7731 = vunpack.c.l.b16 %v1724
  %v7732 = vunpack.c.l.b16 %v1725
  %v7733 = vunpack.c.l.b16 %v1726
  %v7734 = vunpack.c.l.b16 %v1727
  %v7735 = vunpack.c.l.b16 %v1728
  %v7736 = vunpack.c.l.b16 %v1729
  %v7737 = vunpack.c.l.b16 %v1730
  %v7738 = vunpack.c.l.b16 %v1731
  %v7739 = vunpack.c.l.b16 %v1732
  %v7740 = vunpack.c.l.b16 %v1733
  %v7741 = vunpack.c.l.b16 %v1734
  %v7742 = vunpack.c.l.b16 %v1735
  %v7743 = vunpack.c.l.b16 %v1736
  %v7744 = vunpack.c.l.b16 %v1737
  %v7745 = vunpack.c.l.b16 %v1738
  %v7746 = vunpack.c.l.b16 %v1739
  %v7747 = vunpack.c.l.b16 %v1740
  %v7748 = vunpack.c.l.b16 %v1741
  %v7749 = vunpack.c.l.b16 %v1742
  %v7750 = vunpack.c.l.b16 %v1743
  %v7751 = vunpack.c.l.b16 %v1744
  %v7752 = vunpack.c.l.b16 %v1745
  %v7753 = vunpack.c.l.b16 %v1746
  %v7754 = vunpack.c.l.b16 %v1747
  %v7755 = vunpack.c.l.b16 %v1748
  %v7756 = vunpack.c.l.b16 %v1749
  %v7757 = vunpack.c.l.b16 %v1750
  %v7758 = vunpack.c.l.b16 %v1751
  %v7759 = vunpack.c.l.b16 %v1752
  %v7760 = vunpack.c.l.b16 %v1753
  %v7761 = vunpack.c.l.b16 %v1754
  %v7762 = vunpack.c.l.b16 %v1755
  %v7763 = vunpack.c.l.b16 %v1756
  %v7764 = vunpack.c.l.b16 %v1757
  %v7765 = vunpack.c.l.b16 %v1758
  %v7766 = vunpack.c.l.b16 %v1759
  %v7767 = vunpack.c.l.b16 %v1760
  %v7768 = vunpack.c.l.b16 %v1761
  %v7769 = vunpack.c.l.b16 %v1762
  %v7770 = vunpack.c.l.b16 %v1763
  %v7771 = vunpack.c.l.b16 %v1764
  %v7772 = vunpack.c.l.b16 %v1765
  %v7773 = vunpack.c.l.b16 %v1766
  %v7774 = vunpack.c.l.b16 %v1767
  %v7775 = vunpack.c.l.b16 %v1768
  %v7776 = vunpack.c.l.b16 %v1769
  %v7777 = vunpack.c.l.b16 %v1770
  %v7778 = vunpack.c.l.b16 %v1771
  %v7779 = vunpack.c.l.b16 %v1772
  %v7780 = vunpack.c.l.b16 %v1773
  %v7781 = vunpack.c.l.b16 %v1774
  %v7782 = vunpack.c.l.b16 %v1775
  %v7783 = vunpack.c.l.b16 %v1776
  %v7784 = vunpack.c.l.b16 %v1777
  %v7785 = vunpack.c.l.b16 %v1778
  %v7786 = vunpack.c.l.b16 %v1779
  %v7787 = vunpack.c.l.b16 %v1780
  %v7788 = vunpack.c.l.b16 %v1781
  %v7789 = vunpack.c.l.b16 %v1782
  %v7790 = vunpack.c.l.b16 %v1783
  %v7791 = vunpack.c.l.b16 %v1784
  %v7792 = vunpack.c.l.b16 %v1785
  %v7793 = vunpack.c.l.b16 %v1786
  %v7794 = vunpack.c.l.b16 %v1787
  %v7795 = vunpack.c.l.b16 %v1788
  %v7796 = vunpack.c.l.b16 %v1789
  %v7797 = vunpack.c.l.b16 %v1790
  %v7798 = vunpack.c.l.b16 %v1791
  %v7799 = vunpack.c.l.b16 %v1792
  %v7800 = vunpack.c.l.b16 %v1793
  %v7801 = vunpack.c.l.b16 %v1794
  %v7802 = vunpack.c.l.b16 %v1795
  %v7803 = vunpack.c.l.b16 %v1796
  %v7804 = vunpack.c.l.b16 %v1797
  %v7805 = vunpack.c.l.b16 %v1798
  %v7806 = vunpack.c.l.b16 %v1799
  %v7807 = vunpack.c.l.b16 %v1800
  %v7808 = vunpack.c.l.b16 %v1801
  %v7809 = vunpack.c.l.b16 %v1802
  %v7810 = vunpack.c.l.b16 %v1803
  %v7811 = vunpack.c.l.b16 %v1804
  %v7812 = vunpack.c.l.b16 %v1805
  %v7813 = vunpack.c.l.b16 %v1806
  %v7814 = vunpack.c.l.b16 %v1807
  %v7815 = vunpack.c.l.b16 %v1808
  %v7816 = vunpack.c.l.b16 %v1809
  %v7817 = vunpack.c.l.b16 %v1810
  %v7818 = vunpack.c.l.b16 %v1811
  %v7819 = vunpack.c.l.b16 %v1812
  %v7820 = vunpack.c.l.b16 %v1813
  %v7821 = vunpack.c.l.b16 %v1814
  %v7822 = vunpack.c.l.b16 %v1815
  %v7823 = vunpack.c.l.b16 %v1816
  %v7824 = vunpack.c.l.b16 %v1817
  %v7825 = vunpack.c.l.b16 %v1818
  %v7826 = vunpack.c.l.b16 %v1819
  %v7827 = vunpack.c.l.b16 %v1820
  %v7828 = vunpack.c.l.b16 %v1821
  %v7829 = vunpack.c.l.b16 %v1822
  %v7830 = vunpack.c.l.b16 %v1823
  %v7831 = vunpack.c.l.b16 %v1824
  %v7832 = vunpack.c.l.b16 %v1825
  %v7833 = vunpack.c.l.b16 %v1826
  %v7834 = vunpack.c.l.b16 %v1827
  %v7835 = vunpack.c.l.b16 %v1828
  %v7836 = vunpack.c.l.b16 %v1829
  %v7837 = vunpack.c.l.b16 %v1830
  %v7838 = vunpack.c.l.b16 %v1831
  %v7839 = vunpack.c.l.b16 %v1832
  %v7840 = vunpack.c.l.b16 %v1833
  %v7841 = vunpack.c.l.b16 %v1834
  %v7842 = vunpack.c.l.b16 %v1835
  %v7843 = vunpack.c.l.b16 %v1836
  %v7844 = vunpack.c.l.b16 %v1837
  %v7845 = vunpack.c.l.b16 %v1838
  %v7846 = vunpack.c.l.b16 %v1839
  %v7847 = vunpack.c.l.b16 %v1840
  %v7848 = vunpack.c.l.b16 %v1841
  %v7849 = vunpack.c.l.b16 %v1842
  %v7850 = vunpack.c.l.b16 %v1843
  %v7851 = vunpack.c.l.b16 %v1844
  %v7852 = vunpack.c.l.b16 %v1845
  %v7853 = vunpack.c.l.b16 %v1846
  %v7854 = vunpack.c.l.b16 %v1847
  %v7855 = vunpack.c.l.b16 %v1848
  %v7856 = vunpack.c.l.b16 %v1849
  %v7857 = vunpack.c.l.b16 %v1850
  %v7858 = vunpack.c.l.b16 %v1851
  %v7859 = vunpack.c.l.b16 %v1852
  %v7860 = vunpack.c.l.b16 %v1853
  %v7861 = vunpack.c.l.b16 %v1854
  %v7862 = vunpack.c.l.b16 %v1855
  %v7863 = vunpack.c.l.b16 %v1856
  %v7864 = vunpack.c.l.b16 %v1857
  %v7865 = vunpack.c.l.b16 %v1858
  %v7866 = vunpack.c.l.b16 %v1859
  %v7867 = vunpack.c.l.b16 %v1860
  %v7868 = vunpack.c.l.b16 %v1861
  %v7869 = vunpack.c.l.b16 %v1862
  %v7870 = vunpack.c.l.b16 %v1863
  %v7871 = vunpack.c.l.b16 %v1864
  %v7872 = vunpack.c.l.b16 %v1865
  %v7873 = vunpack.c.l.b16 %v1866
  %v7874 = vunpack.c.l.b16 %v1867
  %v7875 = vunpack.c.l.b16 %v1868
  %v7876 = vunpack.c.l.b16 %v1869
  %v7877 = vunpack.c.l.b16 %v1870
  %v7878 = vunpack.c.l.b16 %v1871
  %v7879 = vunpack.c.l.b16 %v1872
  %v7880 = vunpack.c.l.b16 %v1873
  %v7881 = vunpack.c.l.b16 %v1874
  %v7882 = vunpack.c.l.b16 %v1875
  %v7883 = vunpack.c.l.b16 %v1876
  %v7884 = vunpack.c.l.b16 %v1877
  %v7885 = vunpack.c.l.b16 %v1878
  %v7886 = vunpack.c.l.b16 %v1879
  %v7887 = vunpack.c.l.b16 %v1880
  %v7888 = vunpack.c.l.b16 %v1881
  %v7889 = vunpack.c.l.b16 %v1882
  %v7890 = vunpack.c.l.b16 %v1883
  %v7891 = vunpack.c.l.b16 %v1884
  %v7892 = vunpack.c.l.b16 %v1885
  %v7893 = vunpack.c.l.b16 %v1886
  %v7894 = vunpack.c.l.b16 %v1887
  %v7895 = vunpack.c.l.b16 %v1888
  %v7896 = vunpack.c.l.b16 %v1889
  %v7897 = vunpack.c.l.b16 %v1890
  %v7898 = vunpack.c.l.b16 %v1891
  %v7899 = vunpack.c.l.b16 %v1892
  %v7900 = vunpack.c.l.b16 %v1893
  %v7901 = vunpack.c.l.b16 %v1894
  %v7902 = vunpack.c.l.b16 %v1895
  %v7903 = vunpack.c.l.b16 %v1896
  %v7904 = vunpack.c.l.b16 %v1897
  %v7905 = vunpack.c.l.b16 %v1898
  %v7906 = vunpack.c.l.b16 %v1899
  %v7907 = vunpack.c.l.b16 %v1900
  %v7908 = vunpack.c.l.b16 %v1901
  %v7909 = vunpack.c.l.b16 %v1902
  %v7910 = vunpack.c.l.b16 %v1903
  %v7911 = vunpack.c.l.b16 %v1904
  %v7912 = vunpack.c.l.b16 %v1905
  %v7913 = vunpack.c.l.b16 %v1906
  %v7914 = vunpack.c.l.b16 %v1907
  %v7915 = vunpack.c.l.b16 %v1908
  %v7916 = vunpack.c.l.b16 %v1909
  %v7917 = vunpack.c.l.b16 %v1910
  %v7918 = vunpack.c.l.b16 %v1911
  %v7919 = vunpack.c.l.b16 %v1912
  %v7920 = vunpack.c.l.b16 %v1913
  %v7921 = vunpack.c.l.b16 %v1914
  %v7922 = vunpack.c.l.b16 %v1915
  %v7923 = vunpack.c.l.b16 %v1916
  %v7924 = vunpack.c.l.b16 %v1917
  %v7925 = vunpack.c.l.b16 %v1918
  %v7926 = vunpack.c.l.b16 %v1919
  %v7927 = vunpack.c.l.b16 %v1920
  %v7928 = vunpack.c.l.b16 %v1921
  %v7929 = vunpack.c.l.b16 %v1922
  %v7930 = vunpack.c.l.b16 %v1923
  %v7931 = vunpack.c.l.b16 %v1924
  %v7932 = vunpack.c.l.b16 %v1925
  %v7933 = vunpack.c.l.b16 %v1926
  %v7934 = vunpack.c.l.b16 %v1927
  %v7935 = vunpack.c.l.b16 %v1928
  %v7936 = vunpack.c.l.b16 %v1929
  %v7937 = vunpack.c.l.b16 %v1930
  %v7938 = vunpack.c.l.b16 %v1931
  %v7939 = vunpack.c.l.b16 %v1932
  %v7940 = vunpack.c.l.b16 %v1933
  %v7941 = vunpack.c.l.b16 %v1934
  %v7942 = vunpack.c.l.b16 %v1935
  %v7943 = vunpack.c.l.b16 %v1936
  %v7944 = vunpack.c.l.b16 %v1937
  %v7945 = vunpack.c.l.b16 %v1938
  %v7946 = vunpack.c.l.b16 %v1939
  %v7947 = vunpack.c.l.b16 %v1940
  %v7948 = vunpack.c.l.b16 %v1941
  %v7949 = vunpack.c.l.b16 %v1942
  %v7950 = vunpack.c.l.b16 %v1943
  %v7951 = vunpack.c.l.b16 %v1944
  %v7952 = vunpack.c.l.b16 %v1945
  %v7953 = vunpack.c.l.b16 %v1946
  %v7954 = vunpack.c.l.b16 %v1947
  %v7955 = vunpack.c.l.b16 %v1948
  %v7956 = vunpack.c.l.b16 %v1949
  %v7957 = vunpack.c.l.b16 %v1950
  %v7958 = vunpack.c.l.b16 %v1951
  %v7959 = vunpack.c.l.b16 %v1952
  %v7960 = vunpack.c.l.b16 %v1953
  %v7961 = vunpack.c.l.b16 %v1954
  %v7962 = vunpack.c.l.b16 %v1955
  %v7963 = vunpack.c.l.b16 %v1956
  %v7964 = vunpack.c.l.b16 %v1957
  %v7965 = vunpack.c.l.b16 %v1958
  %v7966 = vunpack.c.l.b16 %v1959
  %v7967 = vunpack.c.l.b16 %v1960
  %v7968 = vunpack.c.l.b16 %v1961
  %v7969 = vunpack.c.l.b16 %v1962
  %v7970 = vunpack.c.l.b16 %v1963
  %v7971 = vunpack.c.l.b16 %v1964
  %v7972 = vunpack.c.l.b16 %v1965
  %v7973 = vunpack.c.l.b16 %v1966
  %v7974 = vunpack.c.l.b16 %v1967
  %v7975 = vunpack.c.l.b16 %v1968
  %v7976 = vunpack.c.l.b16 %v1969
  %v7977 = vunpack.c.l.b16 %v1970
  %v7978 = vunpack.c.l.b16 %v1971
  %v7979 = vunpack.c.l.b16 %v1972
  %v7980 = vunpack.c.l.b16 %v1973
  %v7981 = vunpack.c.l.b16 %v1974
  %v7982 = vunpack.c.l.b16 %v1975
  %v7983 = vunpack.c.l.b16 %v1976
  %v7984 = vunpack.c.l.b16 %v1977
  %v7985 = vunpack.c.l.b16 %v1978
  %v7986 = vunpack.c.l.b16 %v1979
  %v7987 = vunpack.c.l.b16 %v1980
  %v7988 = vunpack.c.l.b16 %v1981
  %v7989 = vunpack.c.l.b16 %v1982
  %v7990 = vunpack.c.l.b16 %v1983
  %v7991 = vunpack.c.l.b16 %v1984
  %v7992 = vunpack.c.l.b16 %v1985
  %v7993 = vunpack.c.l.b16 %v1986
  %v7994 = vunpack.c.l.b16 %v1987
  %v7995 = vunpack.c.l.b16 %v1988
  %v7996 = vunpack.c.l.b16 %v1989
  %v7997 = vunpack.c.l.b16 %v1990
  %v7998 = vunpack.c.l.b16 %v1991
  %v7999 = vunpack.c.l.b16 %v1992
  %v8000 = vunpack.c.l.b16 %v1993
  %v8001 = vunpack.c.l.b16 %v1994
  %v8002 = vunpack.c.l.b16 %v1995
  %v8003 = vunpack.c.l.b16 %v1996
  %v8004 = vunpack.c.l.b16 %v1997
  %v8005 = vunpack.c.l.b16 %v1998
  %v8006 = vunpack.c.l.b16 %v1999
  %v8007 = vunpack.c.l.b16 %v2000
  %v8008 = vunpack.c.l.b16 %v2001
  %v8009 = vunpack.c.l.b16 %v2002
  %v8010 = vunpack.c.l.b16 %v2003
  %v8011 = vunpack.c.l.b16 %v2004
  %v8012 = vunpack.c.l.b16 %v2005
  %v8013 = vunpack.c.l.b16 %v2006
  %v8014 = vunpack.c.l.b16 %v2007
  %v8015 = vunpack.c.l.b16 %v2008
  %v8016 = vunpack.c.l.b16 %v2009
  %v8017 = vunpack.c.l.b16 %v2010
  %v8018 = vunpack.c.l.b16 %v2011
  %v8019 = vunpack.c.l.b16 %v2012
  %v8020 = vunpack.c.l.b16 %v2013
  %v8021 = vunpack.c.l.b16 %v2014
  %v8022 = vunpack.c.l.b16 %v2015
  %v8023 = vunpack.c.l.b16 %v2016
  %v8024 = vunpack.c.l.b16 %v2017
  %v8025 = vunpack.c.l.b16 %v2018
  %v8026 = vunpack.c.l.b16 %v2019
  %v8027 = vunpack.c.l.b16 %v2020
  %v8028 = vunpack.c.l.b16 %v2021
  %v8029 = vunpack.c.l.b16 %v2022
  %v8030 = vunpack.c.l.b16 %v2023
  %v8031 = vunpack.c.l.b16 %v2024
  %v8032 = vunpack.c.l.b16 %v2025
  %v8033 = vunpack.c.l.b16 %v2026
  %v8034 = vunpack.c.l.b16 %v2027
  %v8035 = vunpack.c.l.b16 %v2028
  %v8036 = vunpack.c.l.b16 %v2029
  %v8037 = vunpack.c.l.b16 %v2030
  %v8038 = vunpack.c.l.b16 %v2031
  %v8039 = vunpack.c.l.b16 %v2032
  %v8040 = vunpack.c.l.b16 %v2033
  %v8041 = vunpack.c.l.b16 %v2034
  %v8042 = vunpack.c.l.b16 %v2035
  %v8043 = vunpack.c.l.b16 %v2036
  %v8044 = vunpack.c.l.b16 %v2037
  %v8045 = vunpack.c.l.b16 %v2038
  %v8046 = vunpack.c.l.b16 %v2039
  %v8047 = vunpack.c.l.b16 %v2040
  %v8048 = vunpack.c.l.b16 %v2041
  %v8049 = vunpack.c.l.b16 %v2042
  %v8050 = vunpack.c.l.b16 %v2043
  %v8051 = vunpack.c.l.b16 %v2044
  %v8052 = vunpack.c.l.b16 %v2045
  %v8053 = vunpack.c.l.b16 %v2046
  %v8054 = vunpack.c.l.b16 %v2047
  %v8055 = vunpack.c.l.b16 %v2048
  %v8056 = vunpack.c.l.b16 %v2049
  %v8057 = vunpack.c.l.b16 %v2050
  %v8058 = vunpack.c.l.b16 %v2051
  %v8059 = vunpack.c.l.b16 %v2052
  %v8060 = vunpack.c.l.b16 %v2053
  %v8061 = vunpack.c.l.b16 %v2054
  %v8062 = vunpack.c.l.b16 %v2055
  %v8063 = vunpack.c.l.b16 %v2056
  %v8064 = vunpack.c.l.b16 %v2057
  %v8065 = vunpack.c.l.b16 %v2058
  %v8066 = vunpack.c.l.b16 %v2059
  %v8067 = vunpack.c.l.b16 %v2060
  %v8068 = vunpack.c.l.b16 %v2061
  %v8069 = vunpack.c.l.b16 %v2062
  %v8070 = vunpack.c.l.b16 %v2063
  %v8071 = vunpack.c.l.b16 %v2064
  %v8072 = vunpack.c.l.b16 %v2065
  %v8073 = vunpack.c.l.b16 %v2066
  %v8074 = vunpack.c.l.b16 %v2067
  %v8075 = vunpack.c.l.b16 %v2068
  %v8076 = vunpack.c.l.b16 %v2069
  %v8077 = vunpack.c.l.b16 %v2070
  %v8078 = vunpack.c.l.b16 %v2071
  %v8079 = vunpack.c.l.b16 %v2072
  %v8080 = vunpack.c.l.b16 %v2073
  %v8081 = vunpack.c.l.b16 %v2074
  %v8082 = vunpack.c.l.b16 %v2075
  %v8083 = vunpack.c.l.b16 %v2076
  %v8084 = vunpack.c.l.b16 %v2077
  %v8085 = vunpack.c.l.b16 %v2078
  %v8086 = vunpack.c.l.b16 %v2079
  %v8087 = vunpack.c.l.b16 %v2080
  %v8088 = vunpack.c.l.b16 %v2081
  %v8089 = vunpack.c.l.b16 %v2082
  %v8090 = vunpack.c.l.b16 %v2083
  %v8091 = vunpack.c.l.b16 %v2084
  %v8092 = vunpack.c.l.b16 %v2085
  %v8093 = vunpack.c.l.b16 %v2086
  %v8094 = vunpack.c.l.b16 %v2087
  %v8095 = vunpack.c.l.b16 %v2088
  %v8096 = vunpack.c.l.b16 %v2089
  %v8097 = vunpack.c.l.b16 %v2090
  %v8098 = vunpack.c.l.b16 %v2091
  %v8099 = vunpack.c.l.b16 %v2092
  %v8100 = vunpack.c.l.b16 %v2093
  %v8101 = vunpack.c.l.b16 %v2094
  %v8102 = vunpack.c.l.b16 %v2095
  %v8103 = vunpack.c.l.b16 %v2096
  %v8104 = vunpack.c.l.b16 %v2097
  %v8105 = vunpack.c.l.b16 %v2098
  %v8106 = vunpack.c.l.b16 %v2099
  %v8107 = vunpack.c.l.b16 %v2100
  %v8108 = vunpack.c.l.b16 %v2101
  %v8109 = vunpack.c.l.b16 %v2102
  %v8110 = vunpack.c.l.b16 %v2103
  %v8111 = vunpack.c.l.b16 %v2104
  %v8112 = vunpack.c.l.b16 %v2105
  %v8113 = vunpack.c.l.b16 %v2106
  %v8114 = vunpack.c.l.b16 %v2107
  %v8115 = vunpack.c.l.b16 %v2108
  %v8116 = vunpack.c.l.b16 %v2109
  %v8117 = vunpack.c.l.b16 %v2110
  %v8118 = vunpack.c.l.b16 %v2111
  %v8119 = vunpack.c.l.b16 %v2112
  %v8120 = vunpack.c.l.b16 %v2113
  %v8121 = vunpack.c.l.b16 %v2114
  %v8122 = vunpack.c.l.b16 %v2115
  %v8123 = vunpack.c.l.b16 %v2116
  %v8124 = vunpack.c.l.b16 %v2117
  %v8125 = vunpack.c.l.b16 %v2118
  %v8126 = vunpack.c.l.b16 %v2119
  %v8127 = vunpack.c.l.b16 %v2120
  %v8128 = vunpack.c.l.b16 %v2121
  %v8129 = vunpack.c.l.b16 %v2122
  %v8130 = vunpack.c.l.b16 %v2123
  %v8131 = vunpack.c.l.b16 %v2124
  %v8132 = vunpack.c.l.b16 %v2125
  %v8133 = vunpack.c.l.b16 %v2126
  %v8134 = vunpack.c.l.b16 %v2127
  %v8135 = vunpack.c.l.b16 %v2128
  %v8136 = vunpack.c.l.b16 %v2129
  %v8137 = vunpack.c.l.b16 %v2130
  %v8138 = vunpack.c.l.b16 %v2131
  %v8139 = vunpack.c.l.b16 %v2132
  %v8140 = vunpack.c.l.b16 %v2133
  %v8141 = vunpack.c.l.b16 %v2134
  %v8142 = vunpack.c.l.b16 %v2135
  %v8143 = vunpack.c.l.b16 %v2136
  %v8144 = vunpack.c.l.b16 %v2137
  %v8145 = vunpack.c.l.b16 %v2138
  %v8146 = vunpack.c.l.b16 %v2139
  %v8147 = vunpack.c.l.b16 %v2140
  %v8148 = vunpack.c.l.b16 %v2141
  %v8149 = vunpack.c.l.b16 %v2142
  %v8150 = vunpack.c.l.b16 %v2143
  %v8151 = vunpack.c.l.b16 %v2144
  %v8152 = vunpack.c.l.b16 %v2145
  %v8153 = vunpack.c.l.b16 %v2146
  %v8154 = vunpack.c.l.b16 %v2147
  %v8155 = vunpack.c.l.b16 %v2148
  %v8156 = vunpack.c.l.b16 %v2149
  %v8157 = vunpack.c.l.b16 %v2150
  %v8158 = vunpack.c.l.b16 %v2151
  %v8159 = vunpack.c.l.b16 %v2152
  %v8160 = vunpack.c.l.b16 %v2153
  %v8161 = vunpack.c.l.b16 %v2154
  %v8162 = vunpack.c.l.b16 %v2155
  %v8163 = vunpack.c.l.b16 %v2156
  %v8164 = vunpack.c.l.b16 %v2157
  %v8165 = vunpack.c.l.b16 %v2158
  %v8166 = vunpack.c.l.b16 %v2159
  %v8167 = vunpack.c.l.b16 %v2160
  %v8168 = vunpack.c.l.b16 %v2161
  %v8169 = vunpack.c.l.b16 %v2162
  %v8170 = vunpack.c.l.b16 %v2163
  %v8171 = vunpack.c.l.b16 %v2164
  %v8172 = vunpack.c.l.b16 %v2165
  %v8173 = vunpack.c.l.b16 %v2166
  %v8174 = vunpack.c.l.b16 %v2167
  %v8175 = vunpack.c.l.b16 %v2168
  %v8176 = vunpack.c.l.b16 %v2169
  %v8177 = vunpack.c.l.b16 %v2170
  %v8178 = vunpack.c.l.b16 %v2171
  %v8179 = vunpack.c.l.b16 %v2172
  %v8180 = vunpack.c.l.b16 %v2173
  %v8181 = vunpack.c.l.b16 %v2174
  %v8182 = vunpack.c.l.b16 %v2175
  %v8183 = vunpack.c.l.b16 %v2176
  %v8184 = vunpack.c.l.b16 %v2177
  %v8185 = vunpack.c.l.b16 %v2178
  %v8186 = vunpack.c.l.b16 %v2179
  %v8187 = vunpack.c.l.b16 %v2180
  %v8188 = vunpack.c.l.b16 %v2181
  %v8189 = vunpack.c.l.b16 %v2182
  %v8190 = vunpack.c.l.b16 %v2183
  %v8191 = vunpack.c.l.b16 %v2184
  %v8192 = vunpack.c.l.b16 %v2185
  %v8193 = vunpack.c.l.b16 %v2186
  %v8194 = vunpack.c.l.b16 %v2187
  %v8195 = vunpack.c.l.b16 %v2188
  %v8196 = vunpack.c.l.b16 %v2189
  %v8197 = vunpack.c.l.b16 %v2190
  %v8198 = vunpack.c.l.b16 %v2191
  %v8199 = vunpack.c.l.b16 %v2192
  %v8200 = vunpack.c.l.b16 %v2193
  %v8201 = vunpack.c.l.b16 %v2194
  %v8202 = vunpack.c.l.b16 %v2195
  %v8203 = vunpack.c.l.b16 %v2196
  %v8204 = vunpack.c.l.b16 %v2197
  %v8205 = vunpack.c.l.b16 %v2198
  %v8206 = vunpack.c.l.b16 %v2199
  %v8207 = vunpack.c.l.b16 %v2200
  %v8208 = vunpack.c.l.b16 %v2201
  %v8209 = vunpack.c.l.b16 %v2202
  %v8210 = vunpack.c.l.b16 %v2203
  %v8211 = vunpack.c.l.b16 %v2204
  %v8212 = vunpack.c.l.b16 %v2205
  %v8213 = vunpack.c.l.b16 %v2206
  %v8214 = vunpack.c.l.b16 %v2207
  %v8215 = vunpack.c.l.b16 %v2208
  %v8216 = vunpack.c.l.b16 %v2209
  %v8217 = vunpack.c.l.b16 %v2210
  %v8218 = vunpack.c.l.b16 %v2211
  %v8219 = vunpack.c.l.b16 %v2212
  %v8220 = vunpack.c.l.b16 %v2213
  %v8221 = vunpack.c.l.b16 %v2214
  %v8222 = vunpack.c.l.b16 %v2215
  %v8223 = vunpack.c.l.b16 %v2216
  %v8224 = vunpack.c.l.b16 %v2217
  %v8225 = vunpack.c.l.b16 %v2218
  %v8226 = vunpack.c.l.b16 %v2219
  %v8227 = vunpack.c.l.b16 %v2220
  %v8228 = vunpack.c.l.b16 %v2221
  %v8229 = vunpack.c.l.b16 %v2222
  %v8230 = vunpack.c.l.b16 %v2223
  %v8231 = vunpack.c.l.b16 %v2224
  %v8232 = vunpack.c.l.b16 %v2225
  %v8233 = vunpack.c.l.b16 %v2226
  %v8234 = vunpack.c.l.b16 %v2227
  %v8235 = vunpack.c.l.b16 %v2228
  %v8236 = vunpack.c.l.b16 %v2229
  %v8237 = vunpack.c.l.b16 %v2230
  %v8238 = vunpack.c.l.b16 %v2231
  %v8239 = vunpack.c.l.b16 %v2232
  %v8240 = vunpack.c.l.b16 %v2233
  %v8241 = vunpack.c.l.b16 %v2234
  %v8242 = vunpack.c.l.b16 %v2235
  %v8243 = vunpack.c.l.b16 %v2236
  %v8244 = vunpack.c.l.b16 %v2237
  %v8245 = vunpack.c.l.b16 %v2238
  %v8246 = vunpack.c.l.b16 %v2239
  %v8247 = vunpack.c.l.b16 %v2240
  %v8248 = vunpack.c.l.b16 %v2241
  %v8249 = vunpack.c.l.b16 %v2242
  %v8250 = vunpack.c.l.b16 %v2243
  %v8251 = vunpack.c.l.b16 %v2244
  %v8252 = vunpack.c.l.b16 %v2245
  %v8253 = vunpack.c.l.b16 %v2246
  %v8254 = vunpack.c.l.b16 %v2247
  %v8255 = vunpack.c.l.b16 %v2248
  %v8256 = vunpack.c.l.b16 %v2249
  %v8257 = vunpack.c.l.b16 %v2250
  %v8258 = vunpack.c.l.b16 %v2251
  %v8259 = vunpack.c.l.b16 %v2252
  %v8260 = vunpack.c.l.b16 %v2253
  %v8261 = vunpack.c.l.b16 %v2254
  %v8262 = vunpack.c.l.b16 %v2255
  %v8263 = vunpack.c.l.b16 %v2256
  %v8264 = vunpack.c.l.b16 %v2257
  %v8265 = vunpack.c.l.b16 %v2258
  %v8266 = vunpack.c.l.b16 %v2259
  %v8267 = vunpack.c.l.b16 %v2260
  %v8268 = vunpack.c.l.b16 %v2261
  %v8269 = vunpack.c.l.b16 %v2262
  %v8270 = vunpack.c.l.b16 %v2263
  %v8271 = vunpack.c.l.b16 %v2264
  %v8272 = vunpack.c.l.b16 %v2265
  %v8273 = vunpack.c.l.b16 %v2266
  %v8274 = vunpack.c.l.b16 %v2267
  %v8275 = vunpack.c.l.b16 %v2268
  %v8276 = vunpack.c.l.b16 %v2269
  %v8277 = vunpack.c.l.b16 %v2270
  %v8278 = vunpack.c.l.b16 %v2271
  %v8279 = vunpack.c.l.b16 %v2272
  %v8280 = vunpack.c.l.b16 %v2273
  %v8281 = vunpack.c.l.b16 %v2274
  %v8282 = vunpack.c.l.b16 %v2275
  %v8283 = vunpack.c.l.b16 %v2276
  %v8284 = vunpack.c.l.b16 %v2277
  %v8285 = vunpack.c.l.b16 %v2278
  %v8286 = vunpack.c.l.b16 %v2279
  %v8287 = vunpack.c.l.b16 %v2280
  %v8288 = vunpack.c.l.b16 %v2281
  %v8289 = vunpack.c.l.b16 %v2282
  %v8290 = vunpack.c.l.b16 %v2283
  %v8291 = vunpack.c.l.b16 %v2284
  %v8292 = vunpack.c.l.b16 %v2285
  %v8293 = vunpack.c.l.b16 %v2286
  %v8294 = vunpack.c.l.b16 %v2287
  %v8295 = vunpack.c.l.b16 %v2288
  %v8296 = vunpack.c.l.b16 %v2289
  %v8297 = vunpack.c.l.b16 %v2290
  %v8298 = vunpack.c.l.b16 %v2291
  %v8299 = vunpack.c.l.b16 %v2292
  %v8300 = vunpack.c.l.b16 %v2293
  %v8301 = vunpack.c.l.b16 %v2294
  %v8302 = vunpack.c.l.b16 %v2295
  %v8303 = vunpack.c.l.b16 %v2296
  %v8304 = vunpack.c.l.b16 %v2297
  %v8305 = vunpack.c.l.b16 %v2298
  %v8306 = vunpack.c.l.b16 %v2299
  %v8307 = vunpack.c.l.b16 %v2300
  %v8308 = vunpack.c.l.b16 %v2301
  %v8309 = vunpack.c.l.b16 %v2302
  %v8310 = vunpack.c.l.b16 %v2303
  %v8311 = vunpack.c.l.b16 %v2304
  %v8312 = vunpack.c.l.b16 %v2305
  %v8313 = vunpack.c.l.b16 %v2306
  %v8314 = vunpack.c.l.b16 %v2307
  %v8315 = vunpack.c.l.b16 %v2308
  %v8316 = vunpack.c.l.b16 %v2309
  %v8317 = vunpack.c.l.b16 %v2310
  %v8318 = vunpack.c.l.b16 %v2311
  %v8319 = vunpack.c.l.b16 %v2312
  %v8320 = vunpack.c.l.b16 %v2313
  %v8321 = vunpack.c.l.b16 %v2314
  %v8322 = vunpack.c.l.b16 %v2315
  %v8323 = vunpack.c.l.b16 %v2316
  %v8324 = vunpack.c.l.b16 %v2317
  %v8325 = vunpack.c.l.b16 %v2318
  %v8326 = vunpack.c.l.b16 %v2319
  %v8327 = vunpack.c.l.b16 %v2320
  %v8328 = vunpack.c.l.b16 %v2321
  %v8329 = vunpack.c.l.b16 %v2322
  %v8330 = vunpack.c.l.b16 %v2323
  %v8331 = vunpack.c.l.b16 %v2324
  %v8332 = vunpack.c.l.b16 %v2325
  %v8333 = vunpack.c.l.b16 %v2326
  %v8334 = vunpack.c.l.b16 %v2327
  %v8335 = vunpack.c.l.b16 %v2328
  %v8336 = vunpack.c.l.b16 %v2329
  %v8337 = vunpack.c.l.b16 %v2330
  %v8338 = vunpack.c.l.b16 %v2331
  %v8339 = vunpack.c.l.b16 %v2332
  %v8340 = vunpack.c.l.b16 %v2333
  %v8341 = vunpack.c.l.b16 %v2334
  %v8342 = vunpack.c.l.b16 %v2335
  %v8343 = vunpack.c.l.b16 %v2336
  %v8344 = vunpack.c.l.b16 %v2337
  %v8345 = vunpack.c.l.b16 %v2338
  %v8346 = vunpack.c.l.b16 %v2339
  %v8347 = vunpack.c.l.b16 %v2340
  %v8348 = vunpack.c.l.b16 %v2341
  %v8349 = vunpack.c.l.b16 %v2342
  %v8350 = vunpack.c.l.b16 %v2343
  %v8351 = vunpack.c.l.b16 %v2344
  %v8352 = vunpack.c.l.b16 %v2345
  %v8353 = vunpack.c.l.b16 %v2346
  %v8354 = vunpack.c.l.b16 %v2347
  %v8355 = vunpack.c.l.b16 %v2348
  %v8356 = vunpack.c.l.b16 %v2349
  %v8357 = vunpack.c.l.b16 %v2350
  %v8358 = vunpack.c.l.b16 %v2351
  %v8359 = vunpack.c.l.b16 %v2352
  %v8360 = vunpack.c.l.b16 %v2353
  %v8361 = vunpack.c.l.b16 %v2354
  %v8362 = vunpack.c.l.b16 %v2355
  %v8363 = vunpack.c.l.b16 %v2356
  %v8364 = vunpack.c.l.b16 %v2357
  %v8365 = vunpack.c.l.b16 %v2358
  %v8366 = vunpack.c.l.b16 %v2359
  %v8367 = vunpack.c.l.b16 %v2360
  %v8368 = vunpack.c.l.b16 %v2361
  %v8369 = vunpack.c.l.b16 %v2362
  %v8370 = vunpack.c.l.b16 %v2363
  %v8371 = vunpack.c.l.b16 %v2364
  %v8372 = vunpack.c.l.b16 %v2365
  %v8373 = vunpack.c.l.b16 %v2366
  %v8374 = vunpack.c.l.b16 %v2367
  %v8375 = vunpack.c.l.b16 %v2368
  %v8376 = vunpack.c.l.b16 %v2369
  %v8377 = vunpack.c.l.b16 %v2370
  %v8378 = vunpack.c.l.b16 %v2371
  %v8379 = vunpack.c.l.b16 %v2372
  %v8380 = vunpack.c.l.b16 %v2373
  %v8381 = vunpack.c.l.b16 %v2374
  %v8382 = vunpack.c.l.b16 %v2375
  %v8383 = vunpack.c.l.b16 %v2376
  %v8384 = vunpack.c.l.b16 %v2377
  %v8385 = vunpack.c.l.b16 %v2378
  %v8386 = vunpack.c.l.b16 %v2379
  %v8387 = vunpack.c.l.b16 %v2380
  %v8388 = vunpack.c.l.b16 %v2381
  %v8389 = vunpack.c.l.b16 %v2382
  %v8390 = vunpack.c.l.b16 %v2383
  %v8391 = vunpack.c.l.b16 %v2384
  %v8392 = vunpack.c.l.b16 %v2385
  %v8393 = vunpack.c.l.b16 %v2386
  %v8394 = vunpack.c.l.b16 %v2387
  %v8395 = vunpack.c.l.b16 %v2388
  %v8396 = vunpack.c.l.b16 %v2389
  %v8397 = vunpack.c.l.b16 %v2390
  %v8398 = vunpack.c.l.b16 %v2391
  %v8399 = vunpack.c.l.b16 %v2392
  %v8400 = vunpack.c.l.b16 %v2393
  %v8401 = vunpack.c.l.b16 %v2394
  %v8402 = vunpack.c.l.b16 %v2395
  %v8403 = vunpack.c.l.b16 %v2396
  %v8404 = vunpack.c.l.b16 %v2397
  %v8405 = vunpack.c.l.b16 %v2398
  %v8406 = vunpack.c.l.b16 %v2399
  %v8407 = vunpack.c.l.b16 %v2400
  %v8408 = vunpack.c.l.b16 %v2401
  %v8409 = vunpack.c.l.b16 %v2402
  %v8410 = vunpack.c.l.b16 %v2403
  %v8411 = vunpack.c.l.b16 %v2404
  %v8412 = vunpack.c.l.b16 %v2405
  %v8413 = vunpack.c.l.b16 %v2406
  %v8414 = vunpack.c.l.b16 %v2407
  %v8415 = vunpack.c.l.b16 %v2408
  %v8416 = vunpack.c.l.b16 %v2409
  %v8417 = vunpack.c.l.b16 %v2410
  %v8418 = vunpack.c.l.b16 %v2411
  %v8419 = vunpack.c.l.b16 %v2412
  %v8420 = vunpack.c.l.b16 %v2413
  %v8421 = vunpack.c.l.b16 %v2414
  %v8422 = vunpack.c.l.b16 %v2415
  %v8423 = vunpack.c.l.b16 %v2416
  %v8424 = vunpack.c.l.b16 %v2417
  %v8425 = vunpack.c.l.b16 %v2418
  %v8426 = vunpack.c.l.b16 %v2419
  %v8427 = vunpack.c.l.b16 %v2420
  %v8428 = vunpack.c.l.b16 %v2421
  %v8429 = vunpack.c.l.b16 %v2422
  %v8430 = vunpack.c.l.b16 %v2423
  %v8431 = vunpack.c.l.b16 %v2424
  %v8432 = vunpack.c.l.b16 %v2425
  %v8433 = vunpack.c.l.b16 %v2426
  %v8434 = vunpack.c.l.b16 %v2427
  %v8435 = vunpack.c.l.b16 %v2428
  %v8436 = vunpack.c.l.b16 %v2429
  %v8437 = vunpack.c.l.b16 %v2430
  %v8438 = vunpack.c.l.b16 %v2431
  %v8439 = vunpack.c.l.b16 %v2432
  %v8440 = vunpack.c.l.b16 %v2433
  %v8441 = vunpack.c.l.b16 %v2434
  %v8442 = vunpack.c.l.b16 %v2435
  %v8443 = vunpack.c.l.b16 %v2436
  %v8444 = vunpack.c.l.b16 %v2437
  %v8445 = vunpack.c.l.b16 %v2438
  %v8446 = vunpack.c.l.b16 %v2439
  %v8447 = vunpack.c.l.b16 %v2440
  %v8448 = vunpack.c.l.b16 %v2441
  %v8449 = vunpack.c.l.b16 %v2442
  %v8450 = vunpack.c.l.b16 %v2443
  %v8451 = vunpack.c.l.b16 %v2444
  %v8452 = vunpack.c.l.b16 %v2445
  %v8453 = vunpack.c.l.b16 %v2446
  %v8454 = vunpack.c.l.b16 %v2447
  %v8455 = vunpack.c.l.b16 %v2448
  %v8456 = vunpack.c.l.b16 %v2449
  %v8457 = vunpack.c.l.b16 %v2450
  %v8458 = vunpack.c.l.b16 %v2451
  %v8459 = vunpack.c.l.b16 %v2452
  %v8460 = vunpack.c.l.b16 %v2453
  %v8461 = vunpack.c.l.b16 %v2454
  %v8462 = vunpack.c.l.b16 %v2455
  %v8463 = vunpack.c.l.b16 %v2456
  %v8464 = vunpack.c.l.b16 %v2457
  %v8465 = vunpack.c.l.b16 %v2458
  %v8466 = vunpack.c.l.b16 %v2459
  %v8467 = vunpack.c.l.b16 %v2460
  %v8468 = vunpack.c.l.b16 %v2461
  %v8469 = vunpack.c.l.b16 %v2462
  %v8470 = vunpack.c.l.b16 %v2463
  %v8471 = vunpack.c.l.b16 %v2464
  %v8472 = vunpack.c.l.b16 %v2465
  %v8473 = vunpack.c.l.b16 %v2466
  %v8474 = vunpack.c.l.b16 %v2467
  %v8475 = vunpack.c.l.b16 %v2468
  %v8476 = vunpack.c.l.b16 %v2469
  %v8477 = vunpack.c.l.b16 %v2470
  %v8478 = vunpack.c.l.b16 %v2471
  %v8479 = vunpack.c.l.b16 %v2472
  %v8480 = vunpack.c.l.b16 %v2473
  %v8481 = vunpack.c.l.b16 %v2474
  %v8482 = vunpack.c.l.b16 %v2475
  %v8483 = vunpack.c.l.b16 %v2476
  %v8484 = vunpack.c.l.b16 %v2477
  %v8485 = vunpack.c.l.b16 %v2478
  %v8486 = vunpack.c.l.b16 %v2479
  %v8487 = vunpack.c.l.b16 %v2480
  %v8488 = vunpack.c.l.b16 %v2481
  %v8489 = vunpack.c.l.b16 %v2482
  %v8490 = vunpack.c.l.b16 %v2483
  %v8491 = vunpack.c.l.b16 %v2484
  %v8492 = vunpack.c.l.b16 %v2485
  %v8493 = vunpack.c.l.b16 %v2486
  %v8494 = vunpack.c.l.b16 %v2487
  %v8495 = vunpack.c.l.b16 %v2488
  %v8496 = vunpack.c.l.b16 %v2489
  %v8497 = vunpack.c.l.b16 %v2490
  %v8498 = vunpack.c.l.b16 %v2491
  %v8499 = vunpack.c.l.b16 %v2492
  %v8500 = vunpack.c.l.b16 %v2493
  %v8501 = vunpack.c.l.b16 %v2494
  %v8502 = vunpack.c.l.b16 %v2495
  %v8503 = vunpack.c.l.b16 %v2496
  %v8504 = vunpack.c.l.b16 %v2497
  %v8505 = vunpack.c.l.b16 %v2498
  %v8506 = vunpack.c.l.b16 %v2499
  %v8507 = vunpack.c.l.b16 %v2500
  %v8508 = vunpack.c.l.b16 %v2501
  %v8509 = vunpack.c.l.b16 %v2502
  %v8510 = vunpack.c.l.b16 %v2503
  %v8511 = vunpack.c.l.b16 %v2504
  %v8512 = vunpack.c.l.b16 %v2505
  %v8513 = vunpack.c.l.b16 %v2506
  %v8514 = vunpack.c.l.b16 %v2507
  %v8515 = vunpack.c.l.b16 %v2508
  %v8516 = vunpack.c.l.b16 %v2509
  %v8517 = vunpack.c.l.b16 %v2510
  %v8518 = vunpack.c.l.b16 %v2511
  %v8519 = vunpack.c.l.b16 %v2512
  %v8520 = vunpack.c.l.b16 %v2513
  %v8521 = vunpack.c.l.b16 %v2514
  %v8522 = vunpack.c.l.b16 %v2515
  %v8523 = vunpack.c.l.b16 %v2516
  %v8524 = vunpack.c.l.b16 %v2517
  %v8525 = vunpack.c.l.b16 %v2518
  %v8526 = vunpack.c.l.b16 %v2519
  %v8527 = vunpack.c.l.b16 %v2520
  %v8528 = vunpack.c.l.b16 %v2521
  %v8529 = vunpack.c.l.b16 %v2522
  %v8530 = vunpack.c.l.b16 %v2523
  %v8531 = vunpack.c.l.b16 %v2524
  %v8532 = vunpack.c.l.b16 %v2525
  %v8533 = vunpack.c.l.b16 %v2526
  %v8534 = vunpack.c.l.b16 %v2527
  %v8535 = vunpack.c.l.b16 %v2528
  %v8536 = vunpack.c.l.b16 %v2529
  %v8537 = vunpack.c.l.b16 %v2530
  %v8538 = vunpack.c.l.b16 %v2531
  %v8539 = vunpack.c.l.b16 %v2532
  %v8540 = vunpack.c.l.b16 %v2533
  %v8541 = vunpack.c.l.b16 %v2534
  %v8542 = vunpack.c.l.b16 %v2535
  %v8543 = vunpack.c.l.b16 %v2536
  %v8544 = vunpack.c.l.b16 %v2537
  %v8545 = vunpack.c.l.b16 %v2538
  %v8546 = vunpack.c.l.b16 %v2539
  %v8547 = vunpack.c.l.b16 %v2540
  %v8548 = vunpack.c.l.b16 %v2541
  %v8549 = vunpack.c.l.b16 %v2542
  %v8550 = vunpack.c.l.b16 %v2543
  %v8551 = vunpack.c.l.b16 %v2544
  %v8552 = vunpack.c.l.b16 %v2545
  %v8553 = vunpack.c.l.b16 %v2546
  %v8554 = vunpack.c.l.b16 %v2547
  %v8555 = vunpack.c.l.b16 %v2548
  %v8556 = vunpack.c.l.b16 %v2549
  %v8557 = vunpack.c.l.b16 %v2550
  %v8558 = vunpack.c.l.b16 %v2551
  %v8559 = vunpack.c.l.b16 %v2552
  %v8560 = vunpack.c.l.b16 %v2553
  %v8561 = vunpack.c.l.b16 %v2554
  %v8562 = vunpack.c.l.b16 %v2555
  %v8563 = vunpack.c.l.b16 %v2556
  %v8564 = vunpack.c.l.b16 %v2557
  %v8565 = vunpack.c.l.b16 %v2558
  %v8566 = vunpack.c.l.b16 %v2559
  %v8567 = vunpack.c.l.b16 %v2560
  %v8568 = vunpack.c.l.b16 %v2561
  %v8569 = vunpack.c.l.b16 %v2562
  %v8570 = vunpack.c.l.b16 %v2563
  %v8571 = vunpack.c.l.b16 %v2564
  %v8572 = vunpack.c.l.b16 %v2565
  %v8573 = vunpack.c.l.b16 %v2566
  %v8574 = vunpack.c.l.b16 %v2567
  %v8575 = vunpack.c.l.b16 %v2568
  %v8576 = vunpack.c.l.b16 %v2569
  %v8577 = vunpack.c.l.b16 %v2570
  %v8578 = vunpack.c.l.b16 %v2571
  %v8579 = vunpack.c.l.b16 %v2572
  %v8580 = vunpack.c.l.b16 %v2573
  %v8581 = vunpack.c.l.b16 %v2574
  %v8582 = vunpack.c.l.b16 %v2575
  %v8583 = vunpack.c.l.b16 %v2576
  %v8584 = vunpack.c.l.b16 %v2577
  %v8585 = vunpack.c.l.b16 %v2578
  %v8586 = vunpack.c.l.b16 %v2579
  %v8587 = vunpack.c.l.b16 %v2580
  %v8588 = vunpack.c.l.b16 %v2581
  %v8589 = vunpack.c.l.b16 %v2582
  %v8590 = vunpack.c.l.b16 %v2583
  %v8591 = vunpack.c.l.b16 %v2584
  %v8592 = vunpack.c.l.b16 %v2585
  %v8593 = vunpack.c.l.b16 %v2586
  %v8594 = vunpack.c.l.b16 %v2587
  %v8595 = vunpack.c.l.b16 %v2588
  %v8596 = vunpack.c.l.b16 %v2589
  %v8597 = vunpack.c.l.b16 %v2590
  %v8598 = vunpack.c.l.b16 %v2591
  %v8599 = vunpack.c.l.b16 %v2592
  %v8600 = vunpack.c.l.b16 %v2593
  %v8601 = vunpack.c.l.b16 %v2594
  %v8602 = vunpack.c.l.b16 %v2595
  %v8603 = vunpack.c.l.b16 %v2596
  %v8604 = vunpack.c.l.b16 %v2597
  %v8605 = vunpack.c.l.b16 %v2598
  %v8606 = vunpack.c.l.b16 %v2599
  %v8607 = vunpack.c.l.b16 %v2600
  %v8608 = vunpack.c.l.b16 %v2601
  %v8609 = vunpack.c.l.b16 %v2602
  %v8610 = vunpack.c.l.b16 %v2603
  %v8611 = vunpack.c.l.b16 %v2604
  %v8612 = vunpack.c.l.b16 %v2605
  %v8613 = vunpack.c.l.b16 %v2606
  %v8614 = vunpack.c.l.b16 %v2607
  %v8615 = vunpack.c.l.b16 %v2608
  %v8616 = vunpack.c.l.b16 %v2609
  %v8617 = vunpack.c.l.b16 %v2610
  %v8618 = vunpack.c.l.b16 %v2611
  %v8619 = vunpack.c.l.b16 %v2612
  %v8620 = vunpack.c.l.b16 %v2613
  %v8621 = vunpack.c.l.b16 %v2614
  %v8622 = vunpack.c.l.b16 %v2615
  %v8623 = vunpack.c.l.b16 %v2616
  %v8624 = vunpack.c.l.b16 %v2617
  %v8625 = vunpack.c.l.b16 %v2618
  %v8626 = vunpack.c.l.b16 %v2619
  %v8627 = vunpack.c.l.b16 %v2620
  %v8628 = vunpack.c.l.b16 %v2621
  %v8629 = vunpack.c.l.b16 %v2622
  %v8630 = vunpack.c.l.b16 %v2623
  %v8631 = vunpack.c.l.b16 %v2624
  %v8632 = vunpack.c.l.b16 %v2625
  %v8633 = vunpack.c.l.b16 %v2626
  %v8634 = vunpack.c.l.b16 %v2627
  %v8635 = vunpack.c.l.b16 %v2628
  %v8636 = vunpack.c.l.b16 %v2629
  %v8637 = vunpack.c.l.b16 %v2630
  %v8638 = vunpack.c.l.b16 %v2631
  %v8639 = vunpack.c.l.b16 %v2632
  %v8640 = vunpack.c.l.b16 %v2633
  %v8641 = vunpack.c.l.b16 %v2634
  %v8642 = vunpack.c.l.b16 %v2635
  %v8643 = vunpack.c.l.b16 %v2636
  %v8644 = vunpack.c.l.b16 %v2637
  %v8645 = vunpack.c.l.b16 %v2638
  %v8646 = vunpack.c.l.b16 %v2639
  %v8647 = vunpack.c.l.b16 %v2640
  %v8648 = vunpack.c.l.b16 %v2641
  %v8649 = vunpack.c.l.b16 %v2642
  %v8650 = vunpack.c.l.b16 %v2643
  %v8651 = vunpack.c.l.b16 %v2644
  %v8652 = vunpack.c.l.b16 %v2645
  %v8653 = vunpack.c.l.b16 %v2646
  %v8654 = vunpack.c.l.b16 %v2647
  %v8655 = vunpack.c.l.b16 %v2648
  %v8656 = vunpack.c.l.b16 %v2649
  %v8657 = vunpack.c.l.b16 %v2650
  %v8658 = vunpack.c.l.b16 %v2651
  %v8659 = vunpack.c.l.b16 %v2652
  %v8660 = vunpack.c.l.b16 %v2653
  %v8661 = vunpack.c.l.b16 %v2654
  %v8662 = vunpack.c.l.b16 %v2655
  %v8663 = vunpack.c.l.b16 %v2656
  %v8664 = vunpack.c.l.b16 %v2657
  %v8665 = vunpack.c.l.b16 %v2658
  %v8666 = vunpack.c.l.b16 %v2659
  %v8667 = vunpack.c.l.b16 %v2660
  %v8668 = vunpack.c.l.b16 %v2661
  %v8669 = vunpack.c.l.b16 %v2662
  %v8670 = vunpack.c.l.b16 %v2663
  %v8671 = vunpack.c.l.b16 %v2664
  %v8672 = vunpack.c.l.b16 %v2665
  %v8673 = vunpack.c.l.b16 %v2666
  %v8674 = vunpack.c.l.b16 %v2667
  %v8675 = vunpack.c.l.b16 %v2668
  %v8676 = vunpack.c.l.b16 %v2669
  %v8677 = vunpack.c.l.b16 %v2670
  %v8678 = vunpack.c.l.b16 %v2671
  %v8679 = vunpack.c.l.b16 %v2672
  %v8680 = vunpack.c.l.b16 %v2673
  %v8681 = vunpack.c.l.b16 %v2674
  %v8682 = vunpack.c.l.b16 %v2675
  %v8683 = vunpack.c.l.b16 %v2676
  %v8684 = vunpack.c.l.b16 %v2677
  %v8685 = vunpack.c.l.b16 %v2678
  %v8686 = vunpack.c.l.b16 %v2679
  %v8687 = vunpack.c.l.b16 %v2680
  %v8688 = vunpack.c.l.b16 %v2681
  %v8689 = vunpack.c.l.b16 %v2682
  %v8690 = vunpack.c.l.b16 %v2683
  %v8691 = vunpack.c.l.b16 %v2684
  %v8692 = vunpack.c.l.b16 %v2685
  %v8693 = vunpack.c.l.b16 %v2686
  %v8694 = vunpack.c.l.b16 %v2687
  %v8695 = vunpack.c.l.b16 %v2688
  %v8696 = vunpack.c.l.b16 %v2689
  %v8697 = vunpack.c.l.b16 %v2690
  %v8698 = vunpack.c.l.b16 %v2691
  %v8699 = vunpack.c.l.b16 %v2692
  %v8700 = vunpack.c.l.b16 %v2693
  %v8701 = vunpack.c.l.b16 %v2694
  %v8702 = vunpack.c.l.b16 %v2695
  %v8703 = vunpack.c.l.b16 %v2696
  %v8704 = vunpack.c.l.b16 %v2697
  %v8705 = vunpack.c.l.b16 %v2698
  %v8706 = vunpack.c.l.b16 %v2699
  %v8707 = vunpack.c.l.b16 %v2700
  %v8708 = vunpack.c.l.b16 %v2701
  %v8709 = vunpack.c.l.b16 %v2702
  %v8710 = vunpack.c.l.b16 %v2703
  %v8711 = vunpack.c.l.b16 %v2704
  %v8712 = vunpack.c.l.b16 %v2705
  %v8713 = vunpack.c.l.b16 %v2706
  %v8714 = vunpack.c.l.b16 %v2707
  %v8715 = vunpack.c.l.b16 %v2708
  %v8716 = vunpack.c.l.b16 %v2709
  %v8717 = vunpack.c.l.b16 %v2710
  %v8718 = vunpack.c.l.b16 %v2711
  %v8719 = vunpack.c.l.b16 %v2712
  %v8720 = vunpack.c.l.b16 %v2713
  %v8721 = vunpack.c.l.b16 %v2714
  %v8722 = vunpack.c.l.b16 %v2715
  %v8723 = vunpack.c.l.b16 %v2716
  %v8724 = vunpack.c.l.b16 %v2717
  %v8725 = vunpack.c.l.b16 %v2718
  %v8726 = vunpack.c.l.b16 %v2719
  %v8727 = vunpack.c.l.b16 %v2720
  %v8728 = vunpack.c.l.b16 %v2721
  %v8729 = vunpack.c.l.b16 %v2722
  %v8730 = vunpack.c.l.b16 %v2723
  %v8731 = vunpack.c.l.b16 %v2724
  %v8732 = vunpack.c.l.b16 %v2725
  %v8733 = vunpack.c.l.b16 %v2726
  %v8734 = vunpack.c.l.b16 %v2727
  %v8735 = vunpack.c.l.b16 %v2728
  %v8736 = vunpack.c.l.b16 %v2729
  %v8737 = vunpack.c.l.b16 %v2730
  %v8738 = vunpack.c.l.b16 %v2731
  %v8739 = vunpack.c.l.b16 %v2732
  %v8740 = vunpack.c.l.b16 %v2733
  %v8741 = vunpack.c.l.b16 %v2734
  %v8742 = vunpack.c.l.b16 %v2735
  %v8743 = vunpack.c.l.b16 %v2736
  %v8744 = vunpack.c.l.b16 %v2737
  %v8745 = vunpack.c.l.b16 %v2738
  %v8746 = vunpack.c.l.b16 %v2739
  %v8747 = vunpack.c.l.b16 %v2740
  %v8748 = vunpack.c.l.b16 %v2741
  %v8749 = vunpack.c.l.b16 %v2742
  %v8750 = vunpack.c.l.b16 %v2743
  %v8751 = vunpack.c.l.b16 %v2744
  %v8752 = vunpack.c.l.b16 %v2745
  %v8753 = vunpack.c.l.b16 %v2746
  %v8754 = vunpack.c.l.b16 %v2747
  %v8755 = vunpack.c.l.b16 %v2748
  %v8756 = vunpack.c.l.b16 %v2749
  %v8757 = vunpack.c.l.b16 %v2750
  %v8758 = vunpack.c.l.b16 %v2751
  %v8759 = vunpack.c.l.b16 %v2752
  %v8760 = vunpack.c.l.b16 %v2753
  %v8761 = vunpack.c.l.b16 %v2754
  %v8762 = vunpack.c.l.b16 %v2755
  %v8763 = vunpack.c.l.b16 %v2756
  %v8764 = vunpack.c.l.b16 %v2757
  %v8765 = vunpack.c.l.b16 %v2758
  %v8766 = vunpack.c.l.b16 %v2759
  %v8767 = vunpack.c.l.b16 %v2760
  %v8768 = vunpack.c.l.b16 %v2761
  %v8769 = vunpack.c.l.b16 %v2762
  %v8770 = vunpack.c.l.b16 %v2763
  %v8771 = vunpack.c.l.b16 %v2764
  %v8772 = vunpack.c.l.b16 %v2765
  %v8773 = vunpack.c.l.b16 %v2766
  %v8774 = vunpack.c.l.b16 %v2767
  %v8775 = vunpack.c.l.b16 %v2768
  %v8776 = vunpack.c.l.b16 %v2769
  %v8777 = vunpack.c.l.b16 %v2770
  %v8778 = vunpack.c.l.b16 %v2771
  %v8779 = vunpack.c.l.b16 %v2772
  %v8780 = vunpack.c.l.b16 %v2773
  %v8781 = vunpack.c.l.b16 %v2774
  %v8782 = vunpack.c.l.b16 %v2775
  %v8783 = vunpack.c.l.b16 %v2776
  %v8784 = vunpack.c.l.b16 %v2777
  %v8785 = vunpack.c.l.b16 %v2778
  %v8786 = vunpack.c.l.b16 %v2779
  %v8787 = vunpack.c.l.b16 %v2780
  %v8788 = vunpack.c.l.b16 %v2781
  %v8789 = vunpack.c.l.b16 %v2782
  %v8790 = vunpack.c.l.b16 %v2783
  %v8791 = vunpack.c.l.b16 %v2784
  %v8792 = vunpack.c.l.b16 %v2785
  %v8793 = vunpack.c.l.b16 %v2786
  %v8794 = vunpack.c.l.b16 %v2787
  %v8795 = vunpack.c.l.b16 %v2788
  %v8796 = vunpack.c.l.b16 %v2789
  %v8797 = vunpack.c.l.b16 %v2790
  %v8798 = vunpack.c.l.b16 %v2791
  %v8799 = vunpack.c.l.b16 %v2792
  %v8800 = vunpack.c.l.b16 %v2793
  %v8801 = vunpack.c.l.b16 %v2794
  %v8802 = vunpack.c.l.b16 %v2795
  %v8803 = vunpack.c.l.b16 %v2796
  %v8804 = vunpack.c.l.b16 %v2797
  %v8805 = vunpack.c.l.b16 %v2798
  %v8806 = vunpack.c.l.b16 %v2799
  %v8807 = vunpack.c.l.b16 %v2800
  %v8808 = vunpack.c.l.b16 %v2801
  %v8809 = vunpack.c.l.b16 %v2802
  %v8810 = vunpack.c.l.b16 %v2803
  %v8811 = vpack.c.b16 %v6108, %v6107
  %v8812 = vpack.c.b16 %v6110, %v6109
  %v8813 = vpack.c.b16 %v6112, %v6111
  %v8814 = vpack.c.b16 %v6114, %v6113
  %v8815 = vpack.c.b16 %v6116, %v6115
  %v8816 = vpack.c.b16 %v6118, %v6117
  %v8817 = vpack.c.b16 %v6120, %v6119
  %v8818 = vpack.c.b16 %v6122, %v6121
  %v8819 = vpack.c.b16 %v6124, %v6123
  %v8820 = vpack.c.b16 %v6126, %v6125
  %v8821 = vpack.c.b16 %v6128, %v6127
  %v8822 = vpack.c.b16 %v6130, %v6129
  %v8823 = vpack.c.b16 %v6132, %v6131
  %v8824 = vpack.c.b16 %v6134, %v6133
  %v8825 = vpack.c.b16 %v6136, %v6135
  %v8826 = vpack.c.b16 %v6138, %v6137
  %v8827 = vpack.c.b16 %v6140, %v6139
  %v8828 = vpack.c.b16 %v6142, %v6141
  %v8829 = vpack.c.b16 %v6144, %v6143
  %v8830 = vpack.c.b16 %v6146, %v6145
  %v8831 = vpack.c.b16 %v6148, %v6147
  %v8832 = vpack.c.b16 %v6150, %v6149
  %v8833 = vpack.c.b16 %v6152, %v6151
  %v8834 = vpack.c.b16 %v6154, %v6153
  %v8835 = vpack.c.b16 %v6156, %v6155
  %v8836 = vpack.c.b16 %v6158, %v6157
  %v8837 = vpack.c.b16 %v6160, %v6159
  %v8838 = vpack.c.b16 %v6162, %v6161
  %v8839 = vpack.c.b16 %v6164, %v6163
  %v8840 = vpack.c.b16 %v6166, %v6165
  %v8841 = vpack.c.b16 %v6168, %v6167
  %v8842 = vpack.c.b16 %v6170, %v6169
  %v8843 = vpack.c.b16 %v6172, %v6171
  %v8844 = vpack.c.b16 %v6174, %v6173
  %v8845 = vpack.c.b16 %v6176, %v6175
  %v8846 = vpack.c.b16 %v6178, %v6177
  %v8847 = vpack.c.b16 %v6180, %v6179
  %v8848 = vpack.c.b16 %v6182, %v6181
  %v8849 = vpack.c.b16 %v6184, %v6183
  %v8850 = vpack.c.b16 %v6186, %v6185
  %v8851 = vpack.c.b16 %v6188, %v6187
  %v8852 = vpack.c.b16 %v6190, %v6189
  %v8853 = vpack.c.b16 %v6192, %v6191
  %v8854 = vpack.c.b16 %v6194, %v6193
  %v8855 = vpack.c.b16 %v6196, %v6195
  %v8856 = vpack.c.b16 %v6198, %v6197
  %v8857 = vpack.c.b16 %v6200, %v6199
  %v8858 = vpack.c.b16 %v6202, %v6201
  %v8859 = vpack.c.b16 %v6204, %v6203
  %v8860 = vpack.c.b16 %v6206, %v6205
  %v8861 = vpack.c.b16 %v6208, %v6207
  %v8862 = vpack.c.b16 %v6210, %v6209
  %v8863 = vpack.c.b16 %v6212, %v6211
  %v8864 = vpack.c.b16 %v6214, %v6213
  %v8865 = vpack.c.b16 %v6216, %v6215
  %v8866 = vpack.c.b16 %v6218, %v6217
  %v8867 = vpack.c.b16 %v6220, %v6219
  %v8868 = vpack.c.b16 %v6222, %v6221
  %v8869 = vpack.c.b16 %v6224, %v6223
  %v8870 = vpack.c.b16 %v6226, %v6225
  %v8871 = vpack.c.b16 %v6228, %v6227
  %v8872 = vpack.c.b16 %v6230, %v6229
  %v8873 = vpack.c.b16 %v6232, %v6231
  %v8874 = vpack.c.b16 %v6234, %v6233
  %v8875 = vpack.c.b16 %v6236, %v6235
  %v8876 = vpack.c.b16 %v6238, %v6237
  %v8877 = vpack.c.b16 %v6240, %v6239
  %v8878 = vpack.c.b16 %v6242, %v6241
  %v8879 = vpack.c.b16 %v6244, %v6243
  %v8880 = vpack.c.b16 %v6246, %v6245
  %v8881 = vpack.c.b16 %v6248, %v6247
  %v8882 = vpack.c.b16 %v6250, %v6249
  %v8883 = vpack.c.b16 %v6252, %v6251
  %v8884 = vpack.c.b16 %v6254, %v6253
  %v8885 = vpack.c.b16 %v6256, %v6255
  %v8886 = vpack.c.b16 %v6258, %v6257
  %v8887 = vpack.c.b16 %v6260, %v6259
  %v8888 = vpack.c.b16 %v6262, %v6261
  %v8889 = vpack.c.b16 %v6264, %v6263
  %v8890 = vpack.c.b16 %v6266, %v6265
  %v8891 = vpack.c.b16 %v6268, %v6267
  %v8892 = vpack.c.b16 %v6270, %v6269
  %v8893 = vpack.c.b16 %v6272, %v6271
  %v8894 = vpack.c.b16 %v6274, %v6273
  %v8895 = vpack.c.b16 %v6276, %v6275
  %v8896 = vpack.c.b16 %v6278, %v6277
  %v8897 = vpack.c.b16 %v6280, %v6279
  %v8898 = vpack.c.b16 %v6282, %v6281
  %v8899 = vpack.c.b16 %v6284, %v6283
  %v8900 = vpack.c.b16 %v6286, %v6285
  %v8901 = vpack.c.b16 %v6288, %v6287
  %v8902 = vpack.c.b16 %v6290, %v6289
  %v8903 = vpack.c.b16 %v6292, %v6291
  %v8904 = vpack.c.b16 %v6294, %v6293
  %v8905 = vpack.c.b16 %v6296, %v6295
  %v8906 = vpack.c.b16 %v6298, %v6297
  %v8907 = vpack.c.b16 %v6300, %v6299
  %v8908 = vpack.c.b16 %v6302, %v6301
  %v8909 = vpack.c.b16 %v6304, %v6303
  %v8910 = vpack.c.b16 %v6306, %v6305
  %v8911 = vpack.c.b16 %v6308, %v6307
  %v8912 = vpack.c.b16 %v6310, %v6309
  %v8913 = vpack.c.b16 %v6312, %v6311
  %v8914 = vpack.c.b16 %v6314, %v6313
  %v8915 = vpack.c.b16 %v6316, %v6315
  %v8916 = vpack.c.b16 %v6318, %v6317
  %v8917 = vpack.c.b16 %v6320, %v6319
  %v8918 = vpack.c.b16 %v6322, %v6321
  %v8919 = vpack.c.b16 %v6324, %v6323
  %v8920 = vpack.c.b16 %v6326, %v6325
  %v8921 = vpack.c.b16 %v6328, %v6327
  %v8922 = vpack.c.b16 %v6330, %v6329
  %v8923 = vpack.c.b16 %v6332, %v6331
  %v8924 = vpack.c.b16 %v6334, %v6333
  %v8925 = vpack.c.b16 %v6336, %v6335
  %v8926 = vpack.c.b16 %v6338, %v6337
  %v8927 = vpack.c.b16 %v6340, %v6339
  %v8928 = vpack.c.b16 %v6342, %v6341
  %v8929 = vpack.c.b16 %v6344, %v6343
  %v8930 = vpack.c.b16 %v6346, %v6345
  %v8931 = vpack.c.b16 %v6348, %v6347
  %v8932 = vpack.c.b16 %v6350, %v6349
  %v8933 = vpack.c.b16 %v6352, %v6351
  %v8934 = vpack.c.b16 %v6354, %v6353
  %v8935 = vpack.c.b16 %v6356, %v6355
  %v8936 = vpack.c.b16 %v6358, %v6357
  %v8937 = vpack.c.b16 %v6360, %v6359
  %v8938 = vpack.c.b16 %v6362, %v6361
  %v8939 = vpack.c.b16 %v6364, %v6363
  %v8940 = vpack.c.b16 %v6366, %v6365
  %v8941 = vpack.c.b16 %v6368, %v6367
  %v8942 = vpack.c.b16 %v6370, %v6369
  %v8943 = vpack.c.b16 %v6372, %v6371
  %v8944 = vpack.c.b16 %v6374, %v6373
  %v8945 = vpack.c.b16 %v6376, %v6375
  %v8946 = vpack.c.b16 %v6378, %v6377
  %v8947 = vpack.c.b16 %v6380, %v6379
  %v8948 = vpack.c.b16 %v6382, %v6381
  %v8949 = vpack.c.b16 %v6384, %v6383
  %v8950 = vpack.c.b16 %v6386, %v6385
  %v8951 = vpack.c.b16 %v6388, %v6387
  %v8952 = vpack.c.b16 %v6390, %v6389
  %v8953 = vpack.c.b16 %v6392, %v6391
  %v8954 = vpack.c.b16 %v6394, %v6393
  %v8955 = vpack.c.b16 %v6396, %v6395
  %v8956 = vpack.c.b16 %v6398, %v6397
  %v8957 = vpack.c.b16 %v6400, %v6399
  %v8958 = vpack.c.b16 %v6402, %v6401
  %v8959 = vpack.c.b16 %v6404, %v6403
  %v8960 = vpack.c.b16 %v6406, %v6405
  %v8961 = vpack.c.b16 %v6408, %v6407
  %v8962 = vpack.c.b16 %v6410, %v6409
  %v8963 = vpack.c.b16 %v6412, %v6411
  %v8964 = vpack.c.b16 %v6414, %v6413
  %v8965 = vpack.c.b16 %v6416, %v6415
  %v8966 = vpack.c.b16 %v6418, %v6417
  %v8967 = vpack.c.b16 %v6420, %v6419
  %v8968 = vpack.c.b16 %v6422, %v6421
  %v8969 = vpack.c.b16 %v6424, %v6423
  %v8970 = vpack.c.b16 %v6426, %v6425
  %v8971 = vpack.c.b16 %v6428, %v6427
  %v8972 = vpack.c.b16 %v6430, %v6429
  %v8973 = vpack.c.b16 %v6432, %v6431
  %v8974 = vpack.c.b16 %v6434, %v6433
  %v8975 = vpack.c.b16 %v6436, %v6435
  %v8976 = vpack.c.b16 %v6438, %v6437
  %v8977 = vpack.c.b16 %v6440, %v6439
  %v8978 = vpack.c.b16 %v6442, %v6441
  %v8979 = vpack.c.b16 %v6444, %v6443
  %v8980 = vpack.c.b16 %v6446, %v6445
  %v8981 = vpack.c.b16 %v6448, %v6447
  %v8982 = vpack.c.b16 %v6450, %v6449
  %v8983 = vpack.c.b16 %v6452, %v6451
  %v8984 = vpack.c.b16 %v6454, %v6453
  %v8985 = vpack.c.b16 %v6456, %v6455
  %v8986 = vpack.c.b16 %v6458, %v6457
  %v8987 = vpack.c.b16 %v6460, %v6459
  %v8988 = vpack.c.b16 %v6462, %v6461
  %v8989 = vpack.c.b16 %v6464, %v6463
  %v8990 = vpack.c.b16 %v6466, %v6465
  %v8991 = vpack.c.b16 %v6468, %v6467
  %v8992 = vpack.c.b16 %v6470, %v6469
  %v8993 = vpack.c.b16 %v6472, %v6471
  %v8994 = vpack.c.b16 %v6474, %v6473
  %v8995 = vpack.c.b16 %v6476, %v6475
  %v8996 = vpack.c.b16 %v6478, %v6477
  %v8997 = vpack.c.b16 %v6480, %v6479
  %v8998 = vpack.c.b16 %v6482, %v6481
  %v8999 = vpack.c.b16 %v6484, %v6483
  %v9000 = vpack.c.b16 %v6486, %v6485
  %v9001 = vpack.c.b16 %v6488, %v6487
  %v9002 = vpack.c.b16 %v6490, %v6489
  %v9003 = vpack.c.b16 %v6492, %v6491
  %v9004 = vpack.c.b16 %v6494, %v6493
  %v9005 = vpack.c.b16 %v6496, %v6495
  %v9006 = vpack.c.b16 %v6498, %v6497
  %v9007 = vpack.c.b16 %v6500, %v6499
  %v9008 = vpack.c.b16 %v6502, %v6501
  %v9009 = vpack.c.b16 %v6504, %v6503
  %v9010 = vpack.c.b16 %v6506, %v6505
  %v9011 = vpack.c.b16 %v6508, %v6507
  %v9012 = vpack.c.b16 %v6510, %v6509
  %v9013 = vpack.c.b16 %v6512, %v6511
  %v9014 = vpack.c.b16 %v6514, %v6513
  %v9015 = vpack.c.b16 %v6516, %v6515
  %v9016 = vpack.c.b16 %v6518, %v6517
  %v9017 = vpack.c.b16 %v6520, %v6519
  %v9018 = vpack.c.b16 %v6522, %v6521
  %v9019 = vpack.c.b16 %v6524, %v6523
  %v9020 = vpack.c.b16 %v6526, %v6525
  %v9021 = vpack.c.b16 %v6528, %v6527
  %v9022 = vpack.c.b16 %v6530, %v6529
  %v9023 = vpack.c.b16 %v6532, %v6531
  %v9024 = vpack.c.b16 %v6534, %v6533
  %v9025 = vpack.c.b16 %v6536, %v6535
  %v9026 = vpack.c.b16 %v6538, %v6537
  %v9027 = vpack.c.b16 %v6540, %v6539
  %v9028 = vpack.c.b16 %v6542, %v6541
  %v9029 = vpack.c.b16 %v6544, %v6543
  %v9030 = vpack.c.b16 %v6546, %v6545
  %v9031 = vpack.c.b16 %v6548, %v6547
  %v9032 = vpack.c.b16 %v6550, %v6549
  %v9033 = vpack.c.b16 %v6552, %v6551
  %v9034 = vpack.c.b16 %v6554, %v6553
  %v9035 = vpack.c.b16 %v6556, %v6555
  %v9036 = vpack.c.b16 %v6558, %v6557
  %v9037 = vpack.c.b16 %v6560, %v6559
  %v9038 = vpack.c.b16 %v6562, %v6561
  %v9039 = vpack.c.b16 %v6564, %v6563
  %v9040 = vpack.c.b16 %v6566, %v6565
  %v9041 = vpack.c.b16 %v6568, %v6567
  %v9042 = vpack.c.b16 %v6570, %v6569
  %v9043 = vpack.c.b16 %v6572, %v6571
  %v9044 = vpack.c.b16 %v6574, %v6573
  %v9045 = vpack.c.b16 %v6576, %v6575
  %v9046 = vpack.c.b16 %v6578, %v6577
  %v9047 = vpack.c.b16 %v6580, %v6579
  %v9048 = vpack.c.b16 %v6582, %v6581
  %v9049 = vpack.c.b16 %v6584, %v6583
  %v9050 = vpack.c.b16 %v6586, %v6585
  %v9051 = vpack.c.b16 %v6588, %v6587
  %v9052 = vpack.c.b16 %v6590, %v6589
  %v9053 = vpack.c.b16 %v6592, %v6591
  %v9054 = vpack.c.b16 %v6594, %v6593
  %v9055 = vpack.c.b16 %v6596, %v6595
  %v9056 = vpack.c.b16 %v6598, %v6597
  %v9057 = vpack.c.b16 %v6600, %v6599
  %v9058 = vpack.c.b16 %v6602, %v6601
  %v9059 = vpack.c.b16 %v6604, %v6603
  %v9060 = vpack.c.b16 %v6606, %v6605
  %v9061 = vpack.c.b16 %v6608, %v6607
  %v9062 = vpack.c.b16 %v6610, %v6609
  %v9063 = vpack.c.b16 %v6612, %v6611
  %v9064 = vpack.c.b16 %v6614, %v6613
  %v9065 = vpack.c.b16 %v6616, %v6615
  %v9066 = vpack.c.b16 %v6618, %v6617
  %v9067 = vpack.c.b16 %v6620, %v6619
  %v9068 = vpack.c.b16 %v6622, %v6621
  %v9069 = vpack.c.b16 %v6624, %v6623
  %v9070 = vpack.c.b16 %v6626, %v6625
  %v9071 = vpack.c.b16 %v6628, %v6627
  %v9072 = vpack.c.b16 %v6630, %v6629
  %v9073 = vpack.c.b16 %v6632, %v6631
  %v9074 = vpack.c.b16 %v6634, %v6633
  %v9075 = vpack.c.b16 %v6636, %v6635
  %v9076 = vpack.c.b16 %v6638, %v6637
  %v9077 = vpack.c.b16 %v6640, %v6639
  %v9078 = vpack.c.b16 %v6642, %v6641
  %v9079 = vpack.c.b16 %v6644, %v6643
  %v9080 = vpack.c.b16 %v6646, %v6645
  %v9081 = vpack.c.b16 %v6648, %v6647
  %v9082 = vpack.c.b16 %v6650, %v6649
  %v9083 = vpack.c.b16 %v6652, %v6651
  %v9084 = vpack.c.b16 %v6654, %v6653
  %v9085 = vpack.c.b16 %v6656, %v6655
  %v9086 = vpack.c.b16 %v6658, %v6657
  %v9087 = vpack.c.b16 %v6660, %v6659
  %v9088 = vpack.c.b16 %v6662, %v6661
  %v9089 = vpack.c.b16 %v6664, %v6663
  %v9090 = vpack.c.b16 %v6666, %v6665
  %v9091 = vpack.c.b16 %v6668, %v6667
  %v9092 = vpack.c.b16 %v6670, %v6669
  %v9093 = vpack.c.b16 %v6672, %v6671
  %v9094 = vpack.c.b16 %v6674, %v6673
  %v9095 = vpack.c.b16 %v6676, %v6675
  %v9096 = vpack.c.b16 %v6678, %v6677
  %v9097 = vpack.c.b16 %v6680, %v6679
  %v9098 = vpack.c.b16 %v6682, %v6681
  %v9099 = vpack.c.b16 %v6684, %v6683
  %v9100 = vpack.c.b16 %v6686, %v6685
  %v9101 = vpack.c.b16 %v6688, %v6687
  %v9102 = vpack.c.b16 %v6690, %v6689
  %v9103 = vpack.c.b16 %v6692, %v6691
  %v9104 = vpack.c.b16 %v6694, %v6693
  %v9105 = vpack.c.b16 %v6696, %v6695
  %v9106 = vpack.c.b16 %v6698, %v6697
  %v9107 = vpack.c.b16 %v6700, %v6699
  %v9108 = vpack.c.b16 %v6702, %v6701
  %v9109 = vpack.c.b16 %v6704, %v6703
  %v9110 = vpack.c.b16 %v6706, %v6705
  %v9111 = vpack.c.b16 %v6708, %v6707
  %v9112 = vpack.c.b16 %v6710, %v6709
  %v9113 = vpack.c.b16 %v6712, %v6711
  %v9114 = vpack.c.b16 %v6714, %v6713
  %v9115 = vpack.c.b16 %v6716, %v6715
  %v9116 = vpack.c.b16 %v6718, %v6717
  %v9117 = vpack.c.b16 %v6720, %v6719
  %v9118 = vpack.c.b16 %v6722, %v6721
  %v9119 = vpack.c.b16 %v6724, %v6723
  %v9120 = vpack.c.b16 %v6726, %v6725
  %v9121 = vpack.c.b16 %v6728, %v6727
  %v9122 = vpack.c.b16 %v6730, %v6729
  %v9123 = vpack.c.b16 %v6732, %v6731
  %v9124 = vpack.c.b16 %v6734, %v6733
  %v9125 = vpack.c.b16 %v6736, %v6735
  %v9126 = vpack.c.b16 %v6738, %v6737
  %v9127 = vpack.c.b16 %v6740, %v6739
  %v9128 = vpack.c.b16 %v6742, %v6741
  %v9129 = vpack.c.b16 %v6744, %v6743
  %v9130 = vpack.c.b16 %v6746, %v6745
  %v9131 = vpack.c.b16 %v6748, %v6747
  %v9132 = vpack.c.b16 %v6750, %v6749
  %v9133 = vpack.c.b16 %v6752, %v6751
  %v9134 = vpack.c.b16 %v6754, %v6753
  %v9135 = vpack.c.b16 %v6756, %v6755
  %v9136 = vpack.c.b16 %v6758, %v6757
  %v9137 = vpack.c.b16 %v6760, %v6759
  %v9138 = vpack.c.b16 %v6762, %v6761
  %v9139 = vpack.c.b16 %v6764, %v6763
  %v9140 = vpack.c.b16 %v6766, %v6765
  %v9141 = vpack.c.b16 %v6768, %v6767
  %v9142 = vpack.c.b16 %v6770, %v6769
  %v9143 = vpack.c.b16 %v6772, %v6771
  %v9144 = vpack.c.b16 %v6774, %v6773
  %v9145 = vpack.c.b16 %v6776, %v6775
  %v9146 = vpack.c.b16 %v6778, %v6777
  %v9147 = vpack.c.b16 %v6780, %v6779
  %v9148 = vpack.c.b16 %v6782, %v6781
  %v9149 = vpack.c.b16 %v6784, %v6783
  %v9150 = vpack.c.b16 %v6786, %v6785
  %v9151 = vpack.c.b16 %v6788, %v6787
  %v9152 = vpack.c.b16 %v6790, %v6789
  %v9153 = vpack.c.b16 %v6792, %v6791
  %v9154 = vpack.c.b16 %v6794, %v6793
  %v9155 = vpack.c.b16 %v6796, %v6795
  %v9156 = vpack.c.b16 %v6798, %v6797
  %v9157 = vpack.c.b16 %v6800, %v6799
  %v9158 = vpack.c.b16 %v6802, %v6801
  %v9159 = vpack.c.b16 %v6804, %v6803
  %v9160 = vpack.c.b16 %v6806, %v6805
  %v9161 = vpack.c.b16 %v6808, %v6807
  %v9162 = vpack.c.b16 %v6810, %v6809
  %v9163 = vpack.c.b16 %v6812, %v6811
  %v9164 = vpack.c.b16 %v6814, %v6813
  %v9165 = vpack.c.b16 %v6816, %v6815
  %v9166 = vpack.c.b16 %v6818, %v6817
  %v9167 = vpack.c.b16 %v6820, %v6819
  %v9168 = vpack.c.b16 %v6822, %v6821
  %v9169 = vpack.c.b16 %v6824, %v6823
  %v9170 = vpack.c.b16 %v6826, %v6825
  %v9171 = vpack.c.b16 %v6828, %v6827
  %v9172 = vpack.c.b16 %v6830, %v6829
  %v9173 = vpack.c.b16 %v6832, %v6831
  %v9174 = vpack.c.b16 %v6834, %v6833
  %v9175 = vpack.c.b16 %v6836, %v6835
  %v9176 = vpack.c.b16 %v6838, %v6837
  %v9177 = vpack.c.b16 %v6840, %v6839
  %v9178 = vpack.c.b16 %v6842, %v6841
  %v9179 = vpack.c.b16 %v6844, %v6843
  %v9180 = vpack.c.b16 %v6846, %v6845
  %v9181 = vpack.c.b16 %v6848, %v6847
  %v9182 = vpack.c.b16 %v6850, %v6849
  %v9183 = vpack.c.b16 %v6852, %v6851
  %v9184 = vpack.c.b16 %v6854, %v6853
  %v9185 = vpack.c.b16 %v6856, %v6855
  %v9186 = vpack.c.b16 %v6858, %v6857
  %v9187 = vpack.c.b16 %v6860, %v6859
  %v9188 = vpack.c.b16 %v6862, %v6861
  %v9189 = vpack.c.b16 %v6864, %v6863
  %v9190 = vpack.c.b16 %v6866, %v6865
  %v9191 = vpack.c.b16 %v6868, %v6867
  %v9192 = vpack.c.b16 %v6870, %v6869
  %v9193 = vpack.c.b16 %v6872, %v6871
  %v9194 = vpack.c.b16 %v6874, %v6873
  %v9195 = vpack.c.b16 %v6876, %v6875
  %v9196 = vpack.c.b16 %v6878, %v6877
  %v9197 = vpack.c.b16 %v6880, %v6879
  %v9198 = vpack.c.b16 %v6882, %v6881
  %v9199 = vpack.c.b16 %v6884, %v6883
  %v9200 = vpack.c.b16 %v6886, %v6885
  %v9201 = vpack.c.b16 %v6888, %v6887
  %v9202 = vpack.c.b16 %v6890, %v6889
  %v9203 = vpack.c.b16 %v6892, %v6891
  %v9204 = vpack.c.b16 %v6894, %v6893
  %v9205 = vpack.c.b16 %v6896, %v6895
  %v9206 = vpack.c.b16 %v6898, %v6897
  %v9207 = vpack.c.b16 %v6900, %v6899
  %v9208 = vpack.c.b16 %v6902, %v6901
  %v9209 = vpack.c.b16 %v6904, %v6903
  %v9210 = vpack.c.b16 %v6906, %v6905
  %v9211 = vpack.c.b16 %v6908, %v6907
  %v9212 = vpack.c.b16 %v6910, %v6909
  %v9213 = vpack.c.b16 %v6912, %v6911
  %v9214 = vpack.c.b16 %v6914, %v6913
  %v9215 = vpack.c.b16 %v6916, %v6915
  %v9216 = vpack.c.b16 %v6918, %v6917
  %v9217 = vpack.c.b16 %v6920, %v6919
  %v9218 = vpack.c.b16 %v6922, %v6921
  %v9219 = vpack.c.b16 %v6924, %v6923
  %v9220 = vpack.c.b16 %v6926, %v6925
  %v9221 = vpack.c.b16 %v6928, %v6927
  %v9222 = vpack.c.b16 %v6930, %v6929
  %v9223 = vpack.c.b16 %v6932, %v6931
  %v9224 = vpack.c.b16 %v6934, %v6933
  %v9225 = vpack.c.b16 %v6936, %v6935
  %v9226 = vpack.c.b16 %v6938, %v6937
  %v9227 = vpack.c.b16 %v6940, %v6939
  %v9228 = vpack.c.b16 %v6942, %v6941
  %v9229 = vpack.c.b16 %v6944, %v6943
  %v9230 = vpack.c.b16 %v6946, %v6945
  %v9231 = vpack.c.b16 %v6948, %v6947
  %v9232 = vpack.c.b16 %v6950, %v6949
  %v9233 = vpack.c.b16 %v6952, %v6951
  %v9234 = vpack.c.b16 %v6954, %v6953
  %v9235 = vpack.c.b16 %v6956, %v6955
  %v9236 = vpack.c.b16 %v6958, %v6957
  %v9237 = vpack.c.b16 %v6960, %v6959
  %v9238 = vpack.c.b16 %v6962, %v6961
  %v9239 = vpack.c.b16 %v6964, %v6963
  %v9240 = vpack.c.b16 %v6966, %v6965
  %v9241 = vpack.c.b16 %v6968, %v6967
  %v9242 = vpack.c.b16 %v6970, %v6969
  %v9243 = vpack.c.b16 %v6972, %v6971
  %v9244 = vpack.c.b16 %v6974, %v6973
  %v9245 = vpack.c.b16 %v6976, %v6975
  %v9246 = vpack.c.b16 %v6978, %v6977
  %v9247 = vpack.c.b16 %v6980, %v6979
  %v9248 = vpack.c.b16 %v6982, %v6981
  %v9249 = vpack.c.b16 %v6984, %v6983
  %v9250 = vpack.c.b16 %v6986, %v6985
  %v9251 = vpack.c.b16 %v6988, %v6987
  %v9252 = vpack.c.b16 %v6990, %v6989
  %v9253 = vpack.c.b16 %v6992, %v6991
  %v9254 = vpack.c.b16 %v6994, %v6993
  %v9255 = vpack.c.b16 %v6996, %v6995
  %v9256 = vpack.c.b16 %v6998, %v6997
  %v9257 = vpack.c.b16 %v7000, %v6999
  %v9258 = vpack.c.b16 %v7002, %v7001
  %v9259 = vpack.c.b16 %v7004, %v7003
  %v9260 = vpack.c.b16 %v7006, %v7005
  %v9261 = vpack.c.b16 %v7008, %v7007
  %v9262 = vpack.c.b16 %v7010, %v7009
  %v9263 = vpack.c.b16 %v7012, %v7011
  %v9264 = vpack.c.b16 %v7014, %v7013
  %v9265 = vpack.c.b16 %v7016, %v7015
  %v9266 = vpack.c.b16 %v7018, %v7017
  %v9267 = vpack.c.b16 %v7020, %v7019
  %v9268 = vpack.c.b16 %v7022, %v7021
  %v9269 = vpack.c.b16 %v7024, %v7023
  %v9270 = vpack.c.b16 %v7026, %v7025
  %v9271 = vpack.c.b16 %v7028, %v7027
  %v9272 = vpack.c.b16 %v7030, %v7029
  %v9273 = vpack.c.b16 %v7032, %v7031
  %v9274 = vpack.c.b16 %v7034, %v7033
  %v9275 = vpack.c.b16 %v7036, %v7035
  %v9276 = vpack.c.b16 %v7038, %v7037
  %v9277 = vpack.c.b16 %v7040, %v7039
  %v9278 = vpack.c.b16 %v7042, %v7041
  %v9279 = vpack.c.b16 %v7044, %v7043
  %v9280 = vpack.c.b16 %v7046, %v7045
  %v9281 = vpack.c.b16 %v7048, %v7047
  %v9282 = vpack.c.b16 %v7050, %v7049
  %v9283 = vpack.c.b16 %v7052, %v7051
  %v9284 = vpack.c.b16 %v7054, %v7053
  %v9285 = vpack.c.b16 %v7056, %v7055
  %v9286 = vpack.c.b16 %v7058, %v7057
  %v9287 = vpack.c.b16 %v7060, %v7059
  %v9288 = vpack.c.b16 %v7062, %v7061
  %v9289 = vpack.c.b16 %v7064, %v7063
  %v9290 = vpack.c.b16 %v7066, %v7065
  %v9291 = vpack.c.b16 %v7068, %v7067
  %v9292 = vpack.c.b16 %v7070, %v7069
  %v9293 = vpack.c.b16 %v7072, %v7071
  %v9294 = vpack.c.b16 %v7074, %v7073
  %v9295 = vpack.c.b16 %v7076, %v7075
  %v9296 = vpack.c.b16 %v7078, %v7077
  %v9297 = vpack.c.b16 %v7080, %v7079
  %v9298 = vpack.c.b16 %v7082, %v7081
  %v9299 = vpack.c.b16 %v7084, %v7083
  %v9300 = vpack.c.b16 %v7086, %v7085
  %v9301 = vpack.c.b16 %v7088, %v7087
  %v9302 = vpack.c.b16 %v7090, %v7089
  %v9303 = vpack.c.b16 %v7092, %v7091
  %v9304 = vpack.c.b16 %v7094, %v7093
  %v9305 = vpack.c.b16 %v7096, %v7095
  %v9306 = vpack.c.b16 %v7098, %v7097
  %v9307 = vpack.c.b16 %v7100, %v7099
  %v9308 = vpack.c.b16 %v7102, %v7101
  %v9309 = vpack.c.b16 %v7104, %v7103
  %v9310 = vpack.c.b16 %v7106, %v7105
  %v9311 = vpack.c.b16 %v7108, %v7107
  %v9312 = vpack.c.b16 %v7110, %v7109
  %v9313 = vpack.c.b16 %v7112, %v7111
  %v9314 = vpack.c.b16 %v7114, %v7113
  %v9315 = vpack.c.b16 %v7116, %v7115
  %v9316 = vpack.c.b16 %v7118, %v7117
  %v9317 = vpack.c.b16 %v7120, %v7119
  %v9318 = vpack.c.b16 %v7122, %v7121
  %v9319 = vpack.c.b16 %v7124, %v7123
  %v9320 = vpack.c.b16 %v7126, %v7125
  %v9321 = vpack.c.b16 %v7128, %v7127
  %v9322 = vpack.c.b16 %v7130, %v7129
  %v9323 = vpack.c.b16 %v7132, %v7131
  %v9324 = vpack.c.b16 %v7134, %v7133
  %v9325 = vpack.c.b16 %v7136, %v7135
  %v9326 = vpack.c.b16 %v7138, %v7137
  %v9327 = vpack.c.b16 %v7140, %v7139
  %v9328 = vpack.c.b16 %v7142, %v7141
  %v9329 = vpack.c.b16 %v7144, %v7143
  %v9330 = vpack.c.b16 %v7146, %v7145
  %v9331 = vpack.c.b16 %v7148, %v7147
  %v9332 = vpack.c.b16 %v7150, %v7149
  %v9333 = vpack.c.b16 %v7152, %v7151
  %v9334 = vpack.c.b16 %v7154, %v7153
  %v9335 = vpack.c.b16 %v7156, %v7155
  %v9336 = vpack.c.b16 %v7158, %v7157
  %v9337 = vpack.c.b16 %v7160, %v7159
  %v9338 = vpack.c.b16 %v7162, %v7161
  %v9339 = vpack.c.b16 %v7164, %v7163
  %v9340 = vpack.c.b16 %v7166, %v7165
  %v9341 = vpack.c.b16 %v7168, %v7167
  %v9342 = vpack.c.b16 %v7170, %v7169
  %v9343 = vpack.c.b16 %v7172, %v7171
  %v9344 = vpack.c.b16 %v7174, %v7173
  %v9345 = vpack.c.b16 %v7176, %v7175
  %v9346 = vpack.c.b16 %v7178, %v7177
  %v9347 = vpack.c.b16 %v7180, %v7179
  %v9348 = vpack.c.b16 %v7182, %v7181
  %v9349 = vpack.c.b16 %v7184, %v7183
  %v9350 = vpack.c.b16 %v7186, %v7185
  %v9351 = vpack.c.b16 %v7188, %v7187
  %v9352 = vpack.c.b16 %v7190, %v7189
  %v9353 = vpack.c.b16 %v7192, %v7191
  %v9354 = vpack.c.b16 %v7194, %v7193
  %v9355 = vpack.c.b16 %v7196, %v7195
  %v9356 = vpack.c.b16 %v7198, %v7197
  %v9357 = vpack.c.b16 %v7200, %v7199
  %v9358 = vpack.c.b16 %v7202, %v7201
  %v9359 = vpack.c.b16 %v7204, %v7203
  %v9360 = vpack.c.b16 %v7206, %v7205
  %v9361 = vpack.c.b16 %v7208, %v7207
  %v9362 = vpack.c.b16 %v7210, %v7209
  %v9363 = vpack.c.b16 %v7212, %v7211
  %v9364 = vpack.c.b16 %v7214, %v7213
  %v9365 = vpack.c.b16 %v7216, %v7215
  %v9366 = vpack.c.b16 %v7218, %v7217
  %v9367 = vpack.c.b16 %v7220, %v7219
  %v9368 = vpack.c.b16 %v7222, %v7221
  %v9369 = vpack.c.b16 %v7224, %v7223
  %v9370 = vpack.c.b16 %v7226, %v7225
  %v9371 = vpack.c.b16 %v7228, %v7227
  %v9372 = vpack.c.b16 %v7230, %v7229
  %v9373 = vpack.c.b16 %v7232, %v7231
  %v9374 = vpack.c.b16 %v7234, %v7233
  %v9375 = vpack.c.b16 %v7236, %v7235
  %v9376 = vpack.c.b16 %v7238, %v7237
  %v9377 = vpack.c.b16 %v7240, %v7239
  %v9378 = vpack.c.b16 %v7242, %v7241
  %v9379 = vpack.c.b16 %v7244, %v7243
  %v9380 = vpack.c.b16 %v7246, %v7245
  %v9381 = vpack.c.b16 %v7248, %v7247
  %v9382 = vpack.c.b16 %v7250, %v7249
  %v9383 = vpack.c.b16 %v7252, %v7251
  %v9384 = vpack.c.b16 %v7254, %v7253
  %v9385 = vpack.c.b16 %v7256, %v7255
  %v9386 = vpack.c.b16 %v7258, %v7257
  %v9387 = vpack.c.b16 %v7260, %v7259
  %v9388 = vpack.c.b16 %v7262, %v7261
  %v9389 = vpack.c.b16 %v7264, %v7263
  %v9390 = vpack.c.b16 %v7266, %v7265
  %v9391 = vpack.c.b16 %v7268, %v7267
  %v9392 = vpack.c.b16 %v7270, %v7269
  %v9393 = vpack.c.b16 %v7272, %v7271
  %v9394 = vpack.c.b16 %v7274, %v7273
  %v9395 = vpack.c.b16 %v7276, %v7275
  %v9396 = vpack.c.b16 %v7278, %v7277
  %v9397 = vpack.c.b16 %v7280, %v7279
  %v9398 = vpack.c.b16 %v7282, %v7281
  %v9399 = vpack.c.b16 %v7284, %v7283
  %v9400 = vpack.c.b16 %v7286, %v7285
  %v9401 = vpack.c.b16 %v7288, %v7287
  %v9402 = vpack.c.b16 %v7290, %v7289
  %v9403 = vpack.c.b16 %v7292, %v7291
  %v9404 = vpack.c.b16 %v7294, %v7293
  %v9405 = vpack.c.b16 %v7296, %v7295
  %v9406 = vpack.c.b16 %v7298, %v7297
  %v9407 = vpack.c.b16 %v7300, %v7299
  %v9408 = vpack.c.b16 %v7302, %v7301
  %v9409 = vpack.c.b16 %v7304, %v7303
  %v9410 = vpack.c.b16 %v7306, %v7305
  %v9411 = vpack.c.b16 %v7308, %v7307
  %v9412 = vpack.c.b16 %v7310, %v7309
  %v9413 = vpack.c.b16 %v7312, %v7311
  %v9414 = vpack.c.b16 %v7314, %v7313
  %v9415 = vpack.c.b16 %v7316, %v7315
  %v9416 = vpack.c.b16 %v7318, %v7317
  %v9417 = vpack.c.b16 %v7320, %v7319
  %v9418 = vpack.c.b16 %v7322, %v7321
  %v9419 = vpack.c.b16 %v7324, %v7323
  %v9420 = vpack.c.b16 %v7326, %v7325
  %v9421 = vpack.c.b16 %v7328, %v7327
  %v9422 = vpack.c.b16 %v7330, %v7329
  %v9423 = vpack.c.b16 %v7332, %v7331
  %v9424 = vpack.c.b16 %v7334, %v7333
  %v9425 = vpack.c.b16 %v7336, %v7335
  %v9426 = vpack.c.b16 %v7338, %v7337
  %v9427 = vpack.c.b16 %v7340, %v7339
  %v9428 = vpack.c.b16 %v7342, %v7341
  %v9429 = vpack.c.b16 %v7344, %v7343
  %v9430 = vpack.c.b16 %v7346, %v7345
  %v9431 = vpack.c.b16 %v7348, %v7347
  %v9432 = vpack.c.b16 %v7350, %v7349
  %v9433 = vpack.c.b16 %v7352, %v7351
  %v9434 = vpack.c.b16 %v7354, %v7353
  %v9435 = vpack.c.b16 %v7356, %v7355
  %v9436 = vpack.c.b16 %v7358, %v7357
  %v9437 = vpack.c.b16 %v7360, %v7359
  %v9438 = vpack.c.b16 %v7362, %v7361
  %v9439 = vpack.c.b16 %v7364, %v7363
  %v9440 = vpack.c.b16 %v7366, %v7365
  %v9441 = vpack.c.b16 %v7368, %v7367
  %v9442 = vpack.c.b16 %v7370, %v7369
  %v9443 = vpack.c.b16 %v7372, %v7371
  %v9444 = vpack.c.b16 %v7374, %v7373
  %v9445 = vpack.c.b16 %v7376, %v7375
  %v9446 = vpack.c.b16 %v7378, %v7377
  %v9447 = vpack.c.b16 %v7380, %v7379
  %v9448 = vpack.c.b16 %v7382, %v7381
  %v9449 = vpack.c.b16 %v7384, %v7383
  %v9450 = vpack.c.b16 %v7386, %v7385
  %v9451 = vpack.c.b16 %v7388, %v7387
  %v9452 = vpack.c.b16 %v7390, %v7389
  %v9453 = vpack.c.b16 %v7392, %v7391
  %v9454 = vpack.c.b16 %v7394, %v7393
  %v9455 = vpack.c.b16 %v7396, %v7395
  %v9456 = vpack.c.b16 %v7398, %v7397
  %v9457 = vpack.c.b16 %v7400, %v7399
  %v9458 = vpack.c.b16 %v7402, %v7401
  %v9459 = vpack.c.b16 %v7404, %v7403
  %v9460 = vpack.c.b16 %v7406, %v7405
  %v9461 = vpack.c.b16 %v7408, %v7407
  %v9462 = vpack.c.b16 %v7410, %v7409
  %v9463 = vpack.c.b16 %v7412, %v7411
  %v9464 = vpack.c.b16 %v7414, %v7413
  %v9465 = vpack.c.b16 %v7416, %v7415
  %v9466 = vpack.c.b16 %v7418, %v7417
  %v9467 = vpack.c.b16 %v7420, %v7419
  %v9468 = vpack.c.b16 %v7422, %v7421
  %v9469 = vpack.c.b16 %v7424, %v7423
  %v9470 = vpack.c.b16 %v7426, %v7425
  %v9471 = vpack.c.b16 %v7428, %v7427
  %v9472 = vpack.c.b16 %v7430, %v7429
  %v9473 = vpack.c.b16 %v7432, %v7431
  %v9474 = vpack.c.b16 %v7434, %v7433
  %v9475 = vpack.c.b16 %v7436, %v7435
  %v9476 = vpack.c.b16 %v7438, %v7437
  %v9477 = vpack.c.b16 %v7440, %v7439
  %v9478 = vpack.c.b16 %v7442, %v7441
  %v9479 = vpack.c.b16 %v7444, %v7443
  %v9480 = vpack.c.b16 %v7446, %v7445
  %v9481 = vpack.c.b16 %v7448, %v7447
  %v9482 = vpack.c.b16 %v7450, %v7449
  %v9483 = vpack.c.b16 %v7452, %v7451
  %v9484 = vpack.c.b16 %v7454, %v7453
  %v9485 = vpack.c.b16 %v7456, %v7455
  %v9486 = vpack.c.b16 %v7458, %v7457
  %v9487 = vpack.c.b16 %v7460, %v7459
  %v9488 = vpack.c.b16 %v7462, %v7461
  %v9489 = vpack.c.b16 %v7464, %v7463
  %v9490 = vpack.c.b16 %v7466, %v7465
  %v9491 = vpack.c.b16 %v7468, %v7467
  %v9492 = vpack.c.b16 %v7470, %v7469
  %v9493 = vpack.c.b16 %v7472, %v7471
  %v9494 = vpack.c.b16 %v7474, %v7473
  %v9495 = vpack.c.b16 %v7476, %v7475
  %v9496 = vpack.c.b16 %v7478, %v7477
  %v9497 = vpack.c.b16 %v7480, %v7479
  %v9498 = vpack.c.b16 %v7482, %v7481
  %v9499 = vpack.c.b16 %v7484, %v7483
  %v9500 = vpack.c.b16 %v7486, %v7485
  %v9501 = vpack.c.b16 %v7488, %v7487
  %v9502 = vpack.c.b16 %v7490, %v7489
  %v9503 = vpack.c.b16 %v7492, %v7491
  %v9504 = vpack.c.b16 %v7494, %v7493
  %v9505 = vpack.c.b16 %v7496, %v7495
  %v9506 = vpack.c.b16 %v7498, %v7497
  %v9507 = vpack.c.b16 %v7500, %v7499
  %v9508 = vpack.c.b16 %v7502, %v7501
  %v9509 = vpack.c.b16 %v7504, %v7503
  %v9510 = vpack.c.b16 %v7506, %v7505
  %v9511 = vpack.c.b16 %v7508, %v7507
  %v9512 = vpack.c.b16 %v7510, %v7509
  %v9513 = vpack.c.b16 %v7512, %v7511
  %v9514 = vpack.c.b16 %v7514, %v7513
  %v9515 = vpack.c.b16 %v7516, %v7515
  %v9516 = vpack.c.b16 %v7518, %v7517
  %v9517 = vpack.c.b16 %v7520, %v7519
  %v9518 = vpack.c.b16 %v7522, %v7521
  %v9519 = vpack.c.b16 %v7524, %v7523
  %v9520 = vpack.c.b16 %v7526, %v7525
  %v9521 = vpack.c.b16 %v7528, %v7527
  %v9522 = vpack.c.b16 %v7530, %v7529
  %v9523 = vpack.c.b16 %v7532, %v7531
  %v9524 = vpack.c.b16 %v7534, %v7533
  %v9525 = vpack.c.b16 %v7536, %v7535
  %v9526 = vpack.c.b16 %v7538, %v7537
  %v9527 = vpack.c.b16 %v7540, %v7539
  %v9528 = vpack.c.b16 %v7542, %v7541
  %v9529 = vpack.c.b16 %v7544, %v7543
  %v9530 = vpack.c.b16 %v7546, %v7545
  %v9531 = vpack.c.b16 %v7548, %v7547
  %v9532 = vpack.c.b16 %v7550, %v7549
  %v9533 = vpack.c.b16 %v7552, %v7551
  %v9534 = vpack.c.b16 %v7554, %v7553
  %v9535 = vpack.c.b16 %v7556, %v7555
  %v9536 = vpack.c.b16 %v7558, %v7557
  %v9537 = vpack.c.b16 %v7560, %v7559
  %v9538 = vpack.c.b16 %v7562, %v7561
  %v9539 = vpack.c.b16 %v7564, %v7563
  %v9540 = vpack.c.b16 %v7566, %v7565
  %v9541 = vpack.c.b16 %v7568, %v7567
  %v9542 = vpack.c.b16 %v7570, %v7569
  %v9543 = vpack.c.b16 %v7572, %v7571
  %v9544 = vpack.c.b16 %v7574, %v7573
  %v9545 = vpack.c.b16 %v7576, %v7575
  %v9546 = vpack.c.b16 %v7578, %v7577
  %v9547 = vpack.c.b16 %v7580, %v7579
  %v9548 = vpack.c.b16 %v7582, %v7581
  %v9549 = vpack.c.b16 %v7584, %v7583
  %v9550 = vpack.c.b16 %v7586, %v7585
  %v9551 = vpack.c.b16 %v7588, %v7587
  %v9552 = vpack.c.b16 %v7590, %v7589
  %v9553 = vpack.c.b16 %v7592, %v7591
  %v9554 = vpack.c.b16 %v7594, %v7593
  %v9555 = vpack.c.b16 %v7596, %v7595
  %v9556 = vpack.c.b16 %v7598, %v7597
  %v9557 = vpack.c.b16 %v7600, %v7599
  %v9558 = vpack.c.b16 %v7602, %v7601
  %v9559 = vpack.c.b16 %v7604, %v7603
  %v9560 = vpack.c.b16 %v7606, %v7605
  %v9561 = vpack.c.b16 %v7608, %v7607
  %v9562 = vpack.c.b16 %v7610, %v7609
  %v9563 = vpack.c.b16 %v7612, %v7611
  %v9564 = vpack.c.b16 %v7614, %v7613
  %v9565 = vpack.c.b16 %v7616, %v7615
  %v9566 = vpack.c.b16 %v7618, %v7617
  %v9567 = vpack.c.b16 %v7620, %v7619
  %v9568 = vpack.c.b16 %v7622, %v7621
  %v9569 = vpack.c.b16 %v7624, %v7623
  %v9570 = vpack.c.b16 %v7626, %v7625
  %v9571 = vpack.c.b16 %v7628, %v7627
  %v9572 = vpack.c.b16 %v7630, %v7629
  %v9573 = vpack.c.b16 %v7632, %v7631
  %v9574 = vpack.c.b16 %v7634, %v7633
  %v9575 = vpack.c.b16 %v7636, %v7635
  %v9576 = vpack.c.b16 %v7638, %v7637
  %v9577 = vpack.c.b16 %v7640, %v7639
  %v9578 = vpack.c.b16 %v7642, %v7641
  %v9579 = vpack.c.b16 %v7644, %v7643
  %v9580 = vpack.c.b16 %v7646, %v7645
  %v9581 = vpack.c.b16 %v7648, %v7647
  %v9582 = vpack.c.b16 %v7650, %v7649
  %v9583 = vpack.c.b16 %v7652, %v7651
  %v9584 = vpack.c.b16 %v7654, %v7653
  %v9585 = vpack.c.b16 %v7656, %v7655
  %v9586 = vpack.c.b16 %v7658, %v7657
  %v9587 = vpack.c.b16 %v7660, %v7659
  %v9588 = vpack.c.b16 %v7662, %v7661
  %v9589 = vpack.c.b16 %v7664, %v7663
  %v9590 = vpack.c.b16 %v7666, %v7665
  %v9591 = vpack.c.b16 %v7668, %v7667
  %v9592 = vpack.c.b16 %v7670, %v7669
  %v9593 = vpack.c.b16 %v7672, %v7671
  %v9594 = vpack.c.b16 %v7674, %v7673
  %v9595 = vpack.c.b16 %v7676, %v7675
  %v9596 = vpack.c.b16 %v7678, %v7677
  %v9597 = vpack.c.b16 %v7680, %v7679
  %v9598 = vpack.c.b16 %v7682, %v7681
  %v9599 = vpack.c.b16 %v7684, %v7683
  %v9600 = vpack.c.b16 %v7686, %v7685
  %v9601 = vpack.c.b16 %v7688, %v7687
  %v9602 = vpack.c.b16 %v7690, %v7689
  %v9603 = vpack.c.b16 %v7692, %v7691
  %v9604 = vpack.c.b16 %v7694, %v7693
  %v9605 = vpack.c.b16 %v7696, %v7695
  %v9606 = vpack.c.b16 %v7698, %v7697
  %v9607 = vpack.c.b16 %v7700, %v7699
  %v9608 = vpack.c.b16 %v7702, %v7701
  %v9609 = vpack.c.b16 %v7704, %v7703
  %v9610 = vpack.c.b16 %v7706, %v7705
  %v9611 = vpack.c.b16 %v7708, %v7707
  %v9612 = vpack.c.b16 %v7710, %v7709
  %v9613 = vpack.c.b16 %v7712, %v7711
  %v9614 = vpack.c.b16 %v7714, %v7713
  %v9615 = vpack.c.b16 %v7716, %v7715
  %v9616 = vpack.c.b16 %v7718, %v7717
  %v9617 = vpack.c.b16 %v7720, %v7719
  %v9618 = vpack.c.b16 %v7722, %v7721
  %v9619 = vpack.c.b16 %v7724, %v7723
  %v9620 = vpack.c.b16 %v7726, %v7725
  %v9621 = vpack.c.b16 %v7728, %v7727
  %v9622 = vpack.c.b16 %v7730, %v7729
  %v9623 = vpack.c.b16 %v7732, %v7731
  %v9624 = vpack.c.b16 %v7734, %v7733
  %v9625 = vpack.c.b16 %v7736, %v7735
  %v9626 = vpack.c.b16 %v7738, %v7737
  %v9627 = vpack.c.b16 %v7740, %v7739
  %v9628 = vpack.c.b16 %v7742, %v7741
  %v9629 = vpack.c.b16 %v7744, %v7743
  %v9630 = vpack.c.b16 %v7746, %v7745
  %v9631 = vpack.c.b16 %v7748, %v7747
  %v9632 = vpack.c.b16 %v7750, %v7749
  %v9633 = vpack.c.b16 %v7752, %v7751
  %v9634 = vpack.c.b16 %v7754, %v7753
  %v9635 = vpack.c.b16 %v7756, %v7755
  %v9636 = vpack.c.b16 %v7758, %v7757
  %v9637 = vpack.c.b16 %v7760, %v7759
  %v9638 = vpack.c.b16 %v7762, %v7761
  %v9639 = vpack.c.b16 %v7764, %v7763
  %v9640 = vpack.c.b16 %v7766, %v7765
  %v9641 = vpack.c.b16 %v7768, %v7767
  %v9642 = vpack.c.b16 %v7770, %v7769
  %v9643 = vpack.c.b16 %v7772, %v7771
  %v9644 = vpack.c.b16 %v7774, %v7773
  %v9645 = vpack.c.b16 %v7776, %v7775
  %v9646 = vpack.c.b16 %v7778, %v7777
  %v9647 = vpack.c.b16 %v7780, %v7779
  %v9648 = vpack.c.b16 %v7782, %v7781
  %v9649 = vpack.c.b16 %v7784, %v7783
  %v9650 = vpack.c.b16 %v7786, %v7785
  %v9651 = vpack.c.b16 %v7788, %v7787
  %v9652 = vpack.c.b16 %v7790, %v7789
  %v9653 = vpack.c.b16 %v7792, %v7791
  %v9654 = vpack.c.b16 %v7794, %v7793
  %v9655 = vpack.c.b16 %v7796, %v7795
  %v9656 = vpack.c.b16 %v7798, %v7797
  %v9657 = vpack.c.b16 %v7800, %v7799
  %v9658 = vpack.c.b16 %v7802, %v7801
  %v9659 = vpack.c.b16 %v7804, %v7803
  %v9660 = vpack.c.b16 %v7806, %v7805
  %v9661 = vpack.c.b16 %v7808, %v7807
  %v9662 = vpack.c.b16 %v7810, %v7809
  %v9663 = vpack.c.b16 %v7812, %v7811
  %v9664 = vpack.c.b16 %v7814, %v7813
  %v9665 = vpack.c.b16 %v7816, %v7815
  %v9666 = vpack.c.b16 %v7818, %v7817
  %v9667 = vpack.c.b16 %v7820, %v7819
  %v9668 = vpack.c.b16 %v7822, %v7821
  %v9669 = vpack.c.b16 %v7824, %v7823
  %v9670 = vpack.c.b16 %v7826, %v7825
  %v9671 = vpack.c.b16 %v7828, %v7827
  %v9672 = vpack.c.b16 %v7830, %v7829
  %v9673 = vpack.c.b16 %v7832, %v7831
  %v9674 = vpack.c.b16 %v7834, %v7833
  %v9675 = vpack.c.b16 %v7836, %v7835
  %v9676 = vpack.c.b16 %v7838, %v7837
  %v9677 = vpack.c.b16 %v7840, %v7839
  %v9678 = vpack.c.b16 %v7842, %v7841
  %v9679 = vpack.c.b16 %v7844, %v7843
  %v9680 = vpack.c.b16 %v7846, %v7845
  %v9681 = vpack.c.b16 %v7848, %v7847
  %v9682 = vpack.c.b16 %v7850, %v7849
  %v9683 = vpack.c.b16 %v7852, %v7851
  %v9684 = vpack.c.b16 %v7854, %v7853
  %v9685 = vpack.c.b16 %v7856, %v7855
  %v9686 = vpack.c.b16 %v7858, %v7857
  %v9687 = vpack.c.b16 %v7860, %v7859
  %v9688 = vpack.c.b16 %v7862, %v7861
  %v9689 = vpack.c.b16 %v7864, %v7863
  %v9690 = vpack.c.b16 %v7866, %v7865
  %v9691 = vpack.c.b16 %v7868, %v7867
  %v9692 = vpack.c.b16 %v7870, %v7869
  %v9693 = vpack.c.b16 %v7872, %v7871
  %v9694 = vpack.c.b16 %v7874, %v7873
  %v9695 = vpack.c.b16 %v7876, %v7875
  %v9696 = vpack.c.b16 %v7878, %v7877
  %v9697 = vpack.c.b16 %v7880, %v7879
  %v9698 = vpack.c.b16 %v7882, %v7881
  %v9699 = vpack.c.b16 %v7884, %v7883
  %v9700 = vpack.c.b16 %v7886, %v7885
  %v9701 = vpack.c.b16 %v7888, %v7887
  %v9702 = vpack.c.b16 %v7890, %v7889
  %v9703 = vpack.c.b16 %v7892, %v7891
  %v9704 = vpack.c.b16 %v7894, %v7893
  %v9705 = vpack.c.b16 %v7896, %v7895
  %v9706 = vpack.c.b16 %v7898, %v7897
  %v9707 = vpack.c.b16 %v7900, %v7899
  %v9708 = vpack.c.b16 %v7902, %v7901
  %v9709 = vpack.c.b16 %v7904, %v7903
  %v9710 = vpack.c.b16 %v7906, %v7905
  %v9711 = vpack.c.b16 %v7908, %v7907
  %v9712 = vpack.c.b16 %v7910, %v7909
  %v9713 = vpack.c.b16 %v7912, %v7911
  %v9714 = vpack.c.b16 %v7914, %v7913
  %v9715 = vpack.c.b16 %v7916, %v7915
  %v9716 = vpack.c.b16 %v7918, %v7917
  %v9717 = vpack.c.b16 %v7920, %v7919
  %v9718 = vpack.c.b16 %v7922, %v7921
  %v9719 = vpack.c.b16 %v7924, %v7923
  %v9720 = vpack.c.b16 %v7926, %v7925
  %v9721 = vpack.c.b16 %v7928, %v7927
  %v9722 = vpack.c.b16 %v7930, %v7929
  %v9723 = vpack.c.b16 %v7932, %v7931
  %v9724 = vpack.c.b16 %v7934, %v7933
  %v9725 = vpack.c.b16 %v7936, %v7935
  %v9726 = vpack.c.b16 %v7938, %v7937
  %v9727 = vpack.c.b16 %v7940, %v7939
  %v9728 = vpack.c.b16 %v7942, %v7941
  %v9729 = vpack.c.b16 %v7944, %v7943
  %v9730 = vpack.c.b16 %v7946, %v7945
  %v9731 = vpack.c.b16 %v7948, %v7947
  %v9732 = vpack.c.b16 %v7950, %v7949
  %v9733 = vpack.c.b16 %v7952, %v7951
  %v9734 = vpack.c.b16 %v7954, %v7953
  %v9735 = vpack.c.b16 %v7956, %v7955
  %v9736 = vpack.c.b16 %v7958, %v7957
  %v9737 = vpack.c.b16 %v7960, %v7959
  %v9738 = vpack.c.b16 %v7962, %v7961
  %v9739 = vpack.c.b16 %v7964, %v7963
  %v9740 = vpack.c.b16 %v7966, %v7965
  %v9741 = vpack.c.b16 %v7968, %v7967
  %v9742 = vpack.c.b16 %v7970, %v7969
  %v9743 = vpack.c.b16 %v7972, %v7971
  %v9744 = vpack.c.b16 %v7974, %v7973
  %v9745 = vpack.c.b16 %v7976, %v7975
  %v9746 = vpack.c.b16 %v7978, %v7977
  %v9747 = vpack.c.b16 %v7980, %v7979
  %v9748 = vpack.c.b16 %v7982, %v7981
  %v9749 = vpack.c.b16 %v7984, %v7983
  %v9750 = vpack.c.b16 %v7986, %v7985
  %v9751 = vpack.c.b16 %v7988, %v7987
  %v9752 = vpack.c.b16 %v7990, %v7989
  %v9753 = vpack.c.b16 %v7992, %v7991
  %v9754 = vpack.c.b16 %v7994, %v7993
  %v9755 = vpack.c.b16 %v7996, %v7995
  %v9756 = vpack.c.b16 %v7998, %v7997
  %v9757 = vpack.c.b16 %v8000, %v7999
  %v9758 = vpack.c.b16 %v8002, %v8001
  %v9759 = vpack.c.b16 %v8004, %v8003
  %v9760 = vpack.c.b16 %v8006, %v8005
  %v9761 = vpack.c.b16 %v8008, %v8007
  %v9762 = vpack.c.b16 %v8010, %v8009
  %v9763 = vpack.c.b16 %v8012, %v8011
  %v9764 = vpack.c.b16 %v8014, %v8013
  %v9765 = vpack.c.b16 %v8016, %v8015
  %v9766 = vpack.c.b16 %v8018, %v8017
  %v9767 = vpack.c.b16 %v8020, %v8019
  %v9768 = vpack.c.b16 %v8022, %v8021
  %v9769 = vpack.c.b16 %v8024, %v8023
  %v9770 = vpack.c.b16 %v8026, %v8025
  %v9771 = vpack.c.b16 %v8028, %v8027
  %v9772 = vpack.c.b16 %v8030, %v8029
  %v9773 = vpack.c.b16 %v8032, %v8031
  %v9774 = vpack.c.b16 %v8034, %v8033
  %v9775 = vpack.c.b16 %v8036, %v8035
  %v9776 = vpack.c.b16 %v8038, %v8037
  %v9777 = vpack.c.b16 %v8040, %v8039
  %v9778 = vpack.c.b16 %v8042, %v8041
  %v9779 = vpack.c.b16 %v8044, %v8043
  %v9780 = vpack.c.b16 %v8046, %v8045
  %v9781 = vpack.c.b16 %v8048, %v8047
  %v9782 = vpack.c.b16 %v8050, %v8049
  %v9783 = vpack.c.b16 %v8052, %v8051
  %v9784 = vpack.c.b16 %v8054, %v8053
  %v9785 = vpack.c.b16 %v8056, %v8055
  %v9786 = vpack.c.b16 %v8058, %v8057
  %v9787 = vpack.c.b16 %v8060, %v8059
  %v9788 = vpack.c.b16 %v8062, %v8061
  %v9789 = vpack.c.b16 %v8064, %v8063
  %v9790 = vpack.c.b16 %v8066, %v8065
  %v9791 = vpack.c.b16 %v8068, %v8067
  %v9792 = vpack.c.b16 %v8070, %v8069
  %v9793 = vpack.c.b16 %v8072, %v8071
  %v9794 = vpack.c.b16 %v8074, %v8073
  %v9795 = vpack.c.b16 %v8076, %v8075
  %v9796 = vpack.c.b16 %v8078, %v8077
  %v9797 = vpack.c.b16 %v8080, %v8079
  %v9798 = vpack.c.b16 %v8082, %v8081
  %v9799 = vpack.c.b16 %v8084, %v8083
  %v9800 = vpack.c.b16 %v8086, %v8085
  %v9801 = vpack.c.b16 %v8088, %v8087
  %v9802 = vpack.c.b16 %v8090, %v8089
  %v9803 = vpack.c.b16 %v8092, %v8091
  %v9804 = vpack.c.b16 %v8094, %v8093
  %v9805 = vpack.c.b16 %v8096, %v8095
  %v9806 = vpack.c.b16 %v8098, %v8097
  %v9807 = vpack.c.b16 %v8100, %v8099
  %v9808 = vpack.c.b16 %v8102, %v8101
  %v9809 = vpack.c.b16 %v8104, %v8103
  %v9810 = vpack.c.b16 %v8106, %v8105
  %v9811 = vpack.c.b16 %v8108, %v8107
  %v9812 = vpack.c.b16 %v8110, %v8109
  %v9813 = vpack.c.b16 %v8112, %v8111
  %v9814 = vpack.c.b16 %v8114, %v8113
  %v9815 = vpack.c.b16 %v8116, %v8115
  %v9816 = vpack.c.b16 %v8118, %v8117
  %v9817 = vpack.c.b16 %v8120, %v8119
  %v9818 = vpack.c.b16 %v8122, %v8121
  %v9819 = vpack.c.b16 %v8124, %v8123
  %v9820 = vpack.c.b16 %v8126, %v8125
  %v9821 = vpack.c.b16 %v8128, %v8127
  %v9822 = vpack.c.b16 %v8130, %v8129
  %v9823 = vpack.c.b16 %v8132, %v8131
  %v9824 = vpack.c.b16 %v8134, %v8133
  %v9825 = vpack.c.b16 %v8136, %v8135
  %v9826 = vpack.c.b16 %v8138, %v8137
  %v9827 = vpack.c.b16 %v8140, %v8139
  %v9828 = vpack.c.b16 %v8142, %v8141
  %v9829 = vpack.c.b16 %v8144, %v8143
  %v9830 = vpack.c.b16 %v8146, %v8145
  %v9831 = vpack.c.b16 %v8148, %v8147
  %v9832 = vpack.c.b16 %v8150, %v8149
  %v9833 = vpack.c.b16 %v8152, %v8151
  %v9834 = vpack.c.b16 %v8154, %v8153
  %v9835 = vpack.c.b16 %v8156, %v8155
  %v9836 = vpack.c.b16 %v8158, %v8157
  %v9837 = vpack.c.b16 %v8160, %v8159
  %v9838 = vpack.c.b16 %v8162, %v8161
  %v9839 = vpack.c.b16 %v8164, %v8163
  %v9840 = vpack.c.b16 %v8166, %v8165
  %v9841 = vpack.c.b16 %v8168, %v8167
  %v9842 = vpack.c.b16 %v8170, %v8169
  %v9843 = vpack.c.b16 %v8172, %v8171
  %v9844 = vpack.c.b16 %v8174, %v8173
  %v9845 = vpack.c.b16 %v8176, %v8175
  %v9846 = vpack.c.b16 %v8178, %v8177
  %v9847 = vpack.c.b16 %v8180, %v8179
  %v9848 = vpack.c.b16 %v8182, %v8181
  %v9849 = vpack.c.b16 %v8184, %v8183
  %v9850 = vpack.c.b16 %v8186, %v8185
  %v9851 = vpack.c.b16 %v8188, %v8187
  %v9852 = vpack.c.b16 %v8190, %v8189
  %v9853 = vpack.c.b16 %v8192, %v8191
  %v9854 = vpack.c.b16 %v8194, %v8193
  %v9855 = vpack.c.b16 %v8196, %v8195
  %v9856 = vpack.c.b16 %v8198, %v8197
  %v9857 = vpack.c.b16 %v8200, %v8199
  %v9858 = vpack.c.b16 %v8202, %v8201
  %v9859 = vpack.c.b16 %v8204, %v8203
  %v9860 = vpack.c.b16 %v8206, %v8205
  %v9861 = vpack.c.b16 %v8208, %v8207
  %v9862 = vpack.c.b16 %v8210, %v8209
  %v9863 = vpack.c.b16 %v8212, %v8211
  %v9864 = vpack.c.b16 %v8214, %v8213
  %v9865 = vpack.c.b16 %v8216, %v8215
  %v9866 = vpack.c.b16 %v8218, %v8217
  %v9867 = vpack.c.b16 %v8220, %v8219
  %v9868 = vpack.c.b16 %v8222, %v8221
  %v9869 = vpack.c.b16 %v8224, %v8223
  %v9870 = vpack.c.b16 %v8226, %v8225
  %v9871 = vpack.c.b16 %v8228, %v8227
  %v9872 = vpack.c.b16 %v8230, %v8229
  %v9873 = vpack.c.b16 %v8232, %v8231
  %v9874 = vpack.c.b16 %v8234, %v8233
  %v9875 = vpack.c.b16 %v8236, %v8235
  %v9876 = vpack.c.b16 %v8238, %v8237
  %v9877 = vpack.c.b16 %v8240, %v8239
  %v9878 = vpack.c.b16 %v8242, %v8241
  %v9879 = vpack.c.b16 %v8244, %v8243
  %v9880 = vpack.c.b16 %v8246, %v8245
  %v9881 = vpack.c.b16 %v8248, %v8247
  %v9882 = vpack.c.b16 %v8250, %v8249
  %v9883 = vpack.c.b16 %v8252, %v8251
  %v9884 = vpack.c.b16 %v8254, %v8253
  %v9885 = vpack.c.b16 %v8256, %v8255
  %v9886 = vpack.c.b16 %v8258, %v8257
  %v9887 = vpack.c.b16 %v8260, %v8259
  %v9888 = vpack.c.b16 %v8262, %v8261
  %v9889 = vpack.c.b16 %v8264, %v8263
  %v9890 = vpack.c.b16 %v8266, %v8265
  %v9891 = vpack.c.b16 %v8268, %v8267
  %v9892 = vpack.c.b16 %v8270, %v8269
  %v9893 = vpack.c.b16 %v8272, %v8271
  %v9894 = vpack.c.b16 %v8274, %v8273
  %v9895 = vpack.c.b16 %v8276, %v8275
  %v9896 = vpack.c.b16 %v8278, %v8277
  %v9897 = vpack.c.b16 %v8280, %v8279
  %v9898 = vpack.c.b16 %v8282, %v8281
  %v9899 = vpack.c.b16 %v8284, %v8283
  %v9900 = vpack.c.b16 %v8286, %v8285
  %v9901 = vpack.c.b16 %v8288, %v8287
  %v9902 = vpack.c.b16 %v8290, %v8289
  %v9903 = vpack.c.b16 %v8292, %v8291
  %v9904 = vpack.c.b16 %v8294, %v8293
  %v9905 = vpack.c.b16 %v8296, %v8295
  %v9906 = vpack.c.b16 %v8298, %v8297
  %v9907 = vpack.c.b16 %v8300, %v8299
  %v9908 = vpack.c.b16 %v8302, %v8301
  %v9909 = vpack.c.b16 %v8304, %v8303
  %v9910 = vpack.c.b16 %v8306, %v8305
  %v9911 = vpack.c.b16 %v8308, %v8307
  %v9912 = vpack.c.b16 %v8310, %v8309
  %v9913 = vpack.c.b16 %v8312, %v8311
  %v9914 = vpack.c.b16 %v8314, %v8313
  %v9915 = vpack.c.b16 %v8316, %v8315
  %v9916 = vpack.c.b16 %v8318, %v8317
  %v9917 = vpack.c.b16 %v8320, %v8319
  %v9918 = vpack.c.b16 %v8322, %v8321
  %v9919 = vpack.c.b16 %v8324, %v8323
  %v9920 = vpack.c.b16 %v8326, %v8325
  %v9921 = vpack.c.b16 %v8328, %v8327
  %v9922 = vpack.c.b16 %v8330, %v8329
  %v9923 = vpack.c.b16 %v8332, %v8331
  %v9924 = vpack.c.b16 %v8334, %v8333
  %v9925 = vpack.c.b16 %v8336, %v8335
  %v9926 = vpack.c.b16 %v8338, %v8337
  %v9927 = vpack.c.b16 %v8340, %v8339
  %v9928 = vpack.c.b16 %v8342, %v8341
  %v9929 = vpack.c.b16 %v8344, %v8343
  %v9930 = vpack.c.b16 %v8346, %v8345
  %v9931 = vpack.c.b16 %v8348, %v8347
  %v9932 = vpack.c.b16 %v8350, %v8349
  %v9933 = vpack.c.b16 %v8352, %v8351
  %v9934 = vpack.c.b16 %v8354, %v8353
  %v9935 = vpack.c.b16 %v8356, %v8355
  %v9936 = vpack.c.b16 %v8358, %v8357
  %v9937 = vpack.c.b16 %v8360, %v8359
  %v9938 = vpack.c.b16 %v8362, %v8361
  %v9939 = vpack.c.b16 %v8364, %v8363
  %v9940 = vpack.c.b16 %v8366, %v8365
  %v9941 = vpack.c.b16 %v8368, %v8367
  %v9942 = vpack.c.b16 %v8370, %v8369
  %v9943 = vpack.c.b16 %v8372, %v8371
  %v9944 = vpack.c.b16 %v8374, %v8373
  %v9945 = vpack.c.b16 %v8376, %v8375
  %v9946 = vpack.c.b16 %v8378, %v8377
  %v9947 = vpack.c.b16 %v8380, %v8379
  %v9948 = vpack.c.b16 %v8382, %v8381
  %v9949 = vpack.c.b16 %v8384, %v8383
  %v9950 = vpack.c.b16 %v8386, %v8385
  %v9951 = vpack.c.b16 %v8388, %v8387
  %v9952 = vpack.c.b16 %v8390, %v8389
  %v9953 = vpack.c.b16 %v8392, %v8391
  %v9954 = vpack.c.b16 %v8394, %v8393
  %v9955 = vpack.c.b16 %v8396, %v8395
  %v9956 = vpack.c.b16 %v8398, %v8397
  %v9957 = vpack.c.b16 %v8400, %v8399
  %v9958 = vpack.c.b16 %v8402, %v8401
  %v9959 = vpack.c.b16 %v8404, %v8403
  %v9960 = vpack.c.b16 %v8406, %v8405
  %v9961 = vpack.c.b16 %v8408, %v8407
  %v9962 = vpack.c.b16 %v8410, %v8409
  %v9963 = vpack.c.b16 %v8412, %v8411
  %v9964 = vpack.c.b16 %v8414, %v8413
  %v9965 = vpack.c.b16 %v8416, %v8415
  %v9966 = vpack.c.b16 %v8418, %v8417
  %v9967 = vpack.c.b16 %v8420, %v8419
  %v9968 = vpack.c.b16 %v8422, %v8421
  %v9969 = vpack.c.b16 %v8424, %v8423
  %v9970 = vpack.c.b16 %v8426, %v8425
  %v9971 = vpack.c.b16 %v8428, %v8427
  %v9972 = vpack.c.b16 %v8430, %v8429
  %v9973 = vpack.c.b16 %v8432, %v8431
  %v9974 = vpack.c.b16 %v8434, %v8433
  %v9975 = vpack.c.b16 %v8436, %v8435
  %v9976 = vpack.c.b16 %v8438, %v8437
  %v9977 = vpack.c.b16 %v8440, %v8439
  %v9978 = vpack.c.b16 %v8442, %v8441
  %v9979 = vpack.c.b16 %v8444, %v8443
  %v9980 = vpack.c.b16 %v8446, %v8445
  %v9981 = vpack.c.b16 %v8448, %v8447
  %v9982 = vpack.c.b16 %v8450, %v8449
  %v9983 = vpack.c.b16 %v8452, %v8451
  %v9984 = vpack.c.b16 %v8454, %v8453
  %v9985 = vpack.c.b16 %v8456, %v8455
  %v9986 = vpack.c.b16 %v8458, %v8457
  %v9987 = vpack.c.b16 %v8460, %v8459
  %v9988 = vpack.c.b16 %v8462, %v8461
  %v9989 = vpack.c.b16 %v8464, %v8463
  %v9990 = vpack.c.b16 %v8466, %v8465
  %v9991 = vpack.c.b16 %v8468, %v8467
  %v9992 = vpack.c.b16 %v8470, %v8469
  %v9993 = vpack.c.b16 %v8472, %v8471
  %v9994 = vpack.c.b16 %v8474, %v8473
  %v9995 = vpack.c.b16 %v8476, %v8475
  %v9996 = vpack.c.b16 %v8478, %v8477
  %v9997 = vpack.c.b16 %v8480, %v8479
  %v9998 = vpack.c.b16 %v8482, %v8481
  %v9999 = vpack.c.b16 %v8484, %v8483
  %v10000 = vpack.c.b16 %v8486, %v8485
  %v10001 = vpack.c.b16 %v8488, %v8487
  %v10002 = vpack.c.b16 %v8490, %v8489
  %v10003 = vpack.c.b16 %v8492, %v8491
  %v10004 = vpack.c.b16 %v8494, %v8493
  %v10005 = vpack.c.b16 %v8496, %v8495
  %v10006 = vpack.c.b16 %v8498, %v8497
  %v10007 = vpack.c.b16 %v8500, %v8499
  %v10008 = vpack.c.b16 %v8502, %v8501
  %v10009 = vpack.c.b16 %v8504, %v8503
  %v10010 = vpack.c.b16 %v8506, %v8505
  %v10011 = vpack.c.b16 %v8508, %v8507
  %v10012 = vpack.c.b16 %v8510, %v8509
  %v10013 = vpack.c.b16 %v8512, %v8511
  %v10014 = vpack.c.b16 %v8514, %v8513
  %v10015 = vpack.c.b16 %v8516, %v8515
  %v10016 = vpack.c.b16 %v8518, %v8517
  %v10017 = vpack.c.b16 %v8520, %v8519
  %v10018 = vpack.c.b16 %v8522, %v8521
  %v10019 = vpack.c.b16 %v8524, %v8523
  %v10020 = vpack.c.b16 %v8526, %v8525
  %v10021 = vpack.c.b16 %v8528, %v8527
  %v10022 = vpack.c.b16 %v8530, %v8529
  %v10023 = vpack.c.b16 %v8532, %v8531
  %v10024 = vpack.c.b16 %v8534, %v8533
  %v10025 = vpack.c.b16 %v8536, %v8535
  %v10026 = vpack.c.b16 %v8538, %v8537
  %v10027 = vpack.c.b16 %v8540, %v8539
  %v10028 = vpack.c.b16 %v8542, %v8541
  %v10029 = vpack.c.b16 %v8544, %v8543
  %v10030 = vpack.c.b16 %v8546, %v8545
  %v10031 = vpack.c.b16 %v8548, %v8547
  %v10032 = vpack.c.b16 %v8550, %v8549
  %v10033 = vpack.c.b16 %v8552, %v8551
  %v10034 = vpack.c.b16 %v8554, %v8553
  %v10035 = vpack.c.b16 %v8556, %v8555
  %v10036 = vpack.c.b16 %v8558, %v8557
  %v10037 = vpack.c.b16 %v8560, %v8559
  %v10038 = vpack.c.b16 %v8562, %v8561
  %v10039 = vpack.c.b16 %v8564, %v8563
  %v10040 = vpack.c.b16 %v8566, %v8565
  %v10041 = vpack.c.b16 %v8568, %v8567
  %v10042 = vpack.c.b16 %v8570, %v8569
  %v10043 = vpack.c.b16 %v8572, %v8571
  %v10044 = vpack.c.b16 %v8574, %v8573
  %v10045 = vpack.c.b16 %v8576, %v8575
  %v10046 = vpack.c.b16 %v8578, %v8577
  %v10047 = vpack.c.b16 %v8580, %v8579
  %v10048 = vpack.c.b16 %v8582, %v8581
  %v10049 = vpack.c.b16 %v8584, %v8583
  %v10050 = vpack.c.b16 %v8586, %v8585
  %v10051 = vpack.c.b16 %v8588, %v8587
  %v10052 = vpack.c.b16 %v8590, %v8589
  %v10053 = vpack.c.b16 %v8592, %v8591
  %v10054 = vpack.c.b16 %v8594, %v8593
  %v10055 = vpack.c.b16 %v8596, %v8595
  %v10056 = vpack.c.b16 %v8598, %v8597
  %v10057 = vpack.c.b16 %v8600, %v8599
  %v10058 = vpack.c.b16 %v8602, %v8601
  %v10059 = vpack.c.b16 %v8604, %v8603
  %v10060 = vpack.c.b16 %v8606, %v8605
  %v10061 = vpack.c.b16 %v8608, %v8607
  %v10062 = vpack.c.b16 %v8610, %v8609
  %v10063 = vpack.c.b16 %v8612, %v8611
  %v10064 = vpack.c.b16 %v8614, %v8613
  %v10065 = vpack.c.b16 %v8616, %v8615
  %v10066 = vpack.c.b16 %v8618, %v8617
  %v10067 = vpack.c.b16 %v8620, %v8619
  %v10068 = vpack.c.b16 %v8622, %v8621
  %v10069 = vpack.c.b16 %v8624, %v8623
  %v10070 = vpack.c.b16 %v8626, %v8625
  %v10071 = vpack.c.b16 %v8628, %v8627
  %v10072 = vpack.c.b16 %v8630, %v8629
  %v10073 = vpack.c.b16 %v8632, %v8631
  %v10074 = vpack.c.b16 %v8634, %v8633
  %v10075 = vpack.c.b16 %v8636, %v8635
  %v10076 = vpack.c.b16 %v8638, %v8637
  %v10077 = vpack.c.b16 %v8640, %v8639
  %v10078 = vpack.c.b16 %v8642, %v8641
  %v10079 = vpack.c.b16 %v8644, %v8643
  %v10080 = vpack.c.b16 %v8646, %v8645
  %v10081 = vpack.c.b16 %v8648, %v8647
  %v10082 = vpack.c.b16 %v8650, %v8649
  %v10083 = vpack.c.b16 %v8652, %v8651
  %v10084 = vpack.c.b16 %v8654, %v8653
  %v10085 = vpack.c.b16 %v8656, %v8655
  %v10086 = vpack.c.b16 %v8658, %v8657
  %v10087 = vpack.c.b16 %v8660, %v8659
  %v10088 = vpack.c.b16 %v8662, %v8661
  %v10089 = vpack.c.b16 %v8664, %v8663
  %v10090 = vpack.c.b16 %v8666, %v8665
  %v10091 = vpack.c.b16 %v8668, %v8667
  %v10092 = vpack.c.b16 %v8670, %v8669
  %v10093 = vpack.c.b16 %v8672, %v8671
  %v10094 = vpack.c.b16 %v8674, %v8673
  %v10095 = vpack.c.b16 %v8676, %v8675
  %v10096 = vpack.c.b16 %v8678, %v8677
  %v10097 = vpack.c.b16 %v8680, %v8679
  %v10098 = vpack.c.b16 %v8682, %v8681
  %v10099 = vpack.c.b16 %v8684, %v8683
  %v10100 = vpack.c.b16 %v8686, %v8685
  %v10101 = vpack.c.b16 %v8688, %v8687
  %v10102 = vpack.c.b16 %v8690, %v8689
  %v10103 = vpack.c.b16 %v8692, %v8691
  %v10104 = vpack.c.b16 %v8694, %v8693
  %v10105 = vpack.c.b16 %v8696, %v8695
  %v10106 = vpack.c.b16 %v8698, %v8697
  %v10107 = vpack.c.b16 %v8700, %v8699
  %v10108 = vpack.c.b16 %v8702, %v8701
  %v10109 = vpack.c.b16 %v8704, %v8703
  %v10110 = vpack.c.b16 %v8706, %v8705
  %v10111 = vpack.c.b16 %v8708, %v8707
  %v10112 = vpack.c.b16 %v8710, %v8709
  %v10113 = vpack.c.b16 %v8712, %v8711
  %v10114 = vpack.c.b16 %v8714, %v8713
  %v10115 = vpack.c.b16 %v8716, %v8715
  %v10116 = vpack.c.b16 %v8718, %v8717
  %v10117 = vpack.c.b16 %v8720, %v8719
  %v10118 = vpack.c.b16 %v8722, %v8721
  %v10119 = vpack.c.b16 %v8724, %v8723
  %v10120 = vpack.c.b16 %v8726, %v8725
  %v10121 = vpack.c.b16 %v8728, %v8727
  %v10122 = vpack.c.b16 %v8730, %v8729
  %v10123 = vpack.c.b16 %v8732, %v8731
  %v10124 = vpack.c.b16 %v8734, %v8733
  %v10125 = vpack.c.b16 %v8736, %v8735
  %v10126 = vpack.c.b16 %v8738, %v8737
  %v10127 = vpack.c.b16 %v8740, %v8739
  %v10128 = vpack.c.b16 %v8742, %v8741
  %v10129 = vpack.c.b16 %v8744, %v8743
  %v10130 = vpack.c.b16 %v8746, %v8745
  %v10131 = vpack.c.b16 %v8748, %v8747
  %v10132 = vpack.c.b16 %v8750, %v8749
  %v10133 = vpack.c.b16 %v8752, %v8751
  %v10134 = vpack.c.b16 %v8754, %v8753
  %v10135 = vpack.c.b16 %v8756, %v8755
  %v10136 = vpack.c.b16 %v8758, %v8757
  %v10137 = vpack.c.b16 %v8760, %v8759
  %v10138 = vpack.c.b16 %v8762, %v8761
  %v10139 = vpack.c.b16 %v8764, %v8763
  %v10140 = vpack.c.b16 %v8766, %v8765
  %v10141 = vpack.c.b16 %v8768, %v8767
  %v10142 = vpack.c.b16 %v8770, %v8769
  %v10143 = vpack.c.b16 %v8772, %v8771
  %v10144 = vpack.c.b16 %v8774, %v8773
  %v10145 = vpack.c.b16 %v8776, %v8775
  %v10146 = vpack.c.b16 %v8778, %v8777
  %v10147 = vpack.c.b16 %v8780, %v8779
  %v10148 = vpack.c.b16 %v8782, %v8781
  %v10149 = vpack.c.b16 %v8784, %v8783
  %v10150 = vpack.c.b16 %v8786, %v8785
  %v10151 = vpack.c.b16 %v8788, %v8787
  %v10152 = vpack.c.b16 %v8790, %v8789
  %v10153 = vpack.c.b16 %v8792, %v8791
  %v10154 = vpack.c.b16 %v8794, %v8793
  %v10155 = vpack.c.b16 %v8796, %v8795
  %v10156 = vpack.c.b16 %v8798, %v8797
  %v10157 = vpack.c.b16 %v8800, %v8799
  %v10158 = vpack.c.b16 %v8802, %v8801
  %v10159 = vpack.c.b16 %v8804, %v8803
  %v10160 = vpack.c.b16 %v8806, %v8805
  %v10161 = vpack.c.b16 %v8808, %v8807
  %v10162 = vpack.c.b16 %v8810, %v8809
  %11515 = vmatprep.subr.bf16.mxu0 0
  %11516 = vmatpush1.bf16.msra.mxu0 %v8811
  %11517 = vmatprep.subr.bf16.mxu0 0
  %11518 = vmatpush1.bf16.msra.mxu0 %v8812
  %11519 = vmatprep.subr.bf16.mxu0 0
  %11520 = vmatpush1.bf16.msra.mxu0 %v8813
  %11521 = vmatprep.subr.bf16.mxu0 0
  %11522 = vmatpush1.bf16.msra.mxu0 %v8814
  %11523 = vmatprep.subr.bf16.mxu0 0
  %11524 = vmatpush1.bf16.msra.mxu0 %v8815
  %11525 = vmatprep.subr.bf16.mxu0 0
  %11526 = vmatpush1.bf16.msra.mxu0 %v8816
  %11527 = vmatprep.subr.bf16.mxu0 0
  %11528 = vmatpush1.bf16.msra.mxu0 %v8817
  %11529 = vmatprep.subr.bf16.mxu0 0
  %11530 = vmatpush1.bf16.msra.mxu0 %v8818
  %11531 = vmatprep.subr.bf16.mxu0 0
  %11532 = vmatpush1.bf16.msra.mxu0 %v8819
  %11533 = vmatprep.subr.bf16.mxu0 0
  %11534 = vmatpush1.bf16.msra.mxu0 %v8820
  %11535 = vmatprep.subr.bf16.mxu0 0
  %11536 = vmatpush1.bf16.msra.mxu0 %v8821
  %11537 = vmatprep.subr.bf16.mxu0 0
  %11538 = vmatpush1.bf16.msra.mxu0 %v8822
  %11539 = vmatprep.subr.bf16.mxu0 0
  %11540 = vmatpush1.bf16.msra.mxu0 %v8823
  %11541 = vmatprep.subr.bf16.mxu0 0
  %11542 = vmatpush1.bf16.msra.mxu0 %v8824
  %11543 = vmatprep.subr.bf16.mxu0 0
  %11544 = vmatpush1.bf16.msra.mxu0 %v8825
  %11545 = vmatprep.subr.bf16.mxu0 0
  %11546 = vmatpush1.bf16.msra.mxu0 %v8826
  %11547 = vmatprep.mubr.bf16.mxu0 %v3066
  %11548 = vmatmul.mubr.bf16.gmra.mrb[0].mxu0 %v3065
  %v11549 = vpop.f32.mrb[0].mxu0
  %v11550 = vadd.f32 %v2809, %v11549
  %v11551 = vpop.f32.mrb[0].mxu0
  %v11552 = vpop.f32.mrb[0].mxu0
  %v11553 = vpop.f32.mrb[0].mxu0
  %11554 = vdwg.mxu0
  %11555 = vmatprep.subr.bf16.mxu0 0
  %11556 = vmatpush1.bf16.msra.mxu0 %v8827
  %11557 = vmatprep.subr.bf16.mxu0 0
  %11558 = vmatpush1.bf16.msra.mxu0 %v8828
  %11559 = vmatprep.subr.bf16.mxu0 0
  %11560 = vmatpush1.bf16.msra.mxu0 %v8829
  %11561 = vmatprep.subr.bf16.mxu0 0
  %11562 = vmatpush1.bf16.msra.mxu0 %v8830
  %11563 = vmatprep.subr.bf16.mxu0 0
  %11564 = vmatpush1.bf16.msra.mxu0 %v8831
  %11565 = vmatprep.subr.bf16.mxu0 0
  %11566 = vmatpush1.bf16.msra.mxu0 %v8832
  %11567 = vmatprep.subr.bf16.mxu0 0
  %11568 = vmatpush1.bf16.msra.mxu0 %v8833
  %11569 = vmatprep.subr.bf16.mxu0 0
  %11570 = vmatpush1.bf16.msra.mxu0 %v8834
  %11571 = vmatprep.subr.bf16.mxu0 0
  %11572 = vmatpush1.bf16.msra.mxu0 %v8835
  %11573 = vmatprep.subr.bf16.mxu0 0
  %11574 = vmatpush1.bf16.msra.mxu0 %v8836
  %11575 = vmatprep.subr.bf16.mxu0 0
  %11576 = vmatpush1.bf16.msra.mxu0 %v8837
  %11577 = vmatprep.subr.bf16.mxu0 0
  %11578 = vmatpush1.bf16.msra.mxu0 %v8838
  %11579 = vmatprep.subr.bf16.mxu0 0
  %11580 = vmatpush1.bf16.msra.mxu0 %v8839
  %11581 = vmatprep.subr.bf16.mxu0 0
  %11582 = vmatpush1.bf16.msra.mxu0 %v8840
  %11583 = vmatprep.subr.bf16.mxu0 0
  %11584 = vmatpush1.bf16.msra.mxu0 %v8841
  %11585 = vmatprep.subr.bf16.mxu0 0
  %11586 = vmatpush1.bf16.msra.mxu0 %v8842
  %11587 = vmatprep.mubr.bf16.mxu0 %v3068
  %11588 = vmatmul.mubr.bf16.gmra.mrb[0].mxu0 %v3067
  %v11589 = vpop.f32.mrb[0].mxu0
  %v11590 = vadd.f32 %v11550, %v11589
  %v11591 = vpop.f32.mrb[0].mxu0
  %v11592 = vpop.f32.mrb[0].mxu0
  %v11593 = vpop.f32.mrb[0].mxu0
  %11594 = vdwg.mxu0
  %11595 = vmatprep.subr.bf16.mxu0 0
  %11596 = vmatpush1.bf16.msra.mxu0 %v8843
  %11597 = vmatprep.subr.bf16.mxu0 0
  %11598 = vmatpush1.bf16.msra.mxu0 %v8844
  %11599 = vmatprep.subr.bf16.mxu0 0
  %11600 = vmatpush1.bf16.msra.mxu0 %v8845
  %11601 = vmatprep.subr.bf16.mxu0 0
  %11602 = vmatpush1.bf16.msra.mxu0 %v8846
  %11603 = vmatprep.subr.bf16.mxu0 0
  %11604 = vmatpush1.bf16.msra.mxu0 %v8847
  %11605 = vmatprep.subr.bf16.mxu0 0
  %11606 = vmatpush1.bf16.msra.mxu0 %v8848
  %11607 = vmatprep.subr.bf16.mxu0 0
  %11608 = vmatpush1.bf16.msra.mxu0 %v8849
  %11609 = vmatprep.subr.bf16.mxu0 0
  %11610 = vmatpush1.bf16.msra.mxu0 %v8850
  %11611 = vmatprep.subr.bf16.mxu0 0
  %11612 = vmatpush1.bf16.msra.mxu0 %v8851
  %11613 = vmatprep.subr.bf16.mxu0 0
  %11614 = vmatpush1.bf16.msra.mxu0 %v8852
  %11615 = vmatprep.subr.bf16.mxu0 0
  %11616 = vmatpush1.bf16.msra.mxu0 %v8853
  %11617 = vmatprep.subr.bf16.mxu0 0
  %11618 = vmatpush1.bf16.msra.mxu0 %v8854
  %11619 = vmatprep.subr.bf16.mxu0 0
  %11620 = vmatpush1.bf16.msra.mxu0 %v8855
  %11621 = vmatprep.subr.bf16.mxu0 0
  %11622 = vmatpush1.bf16.msra.mxu0 %v8856
  %11623 = vmatprep.subr.bf16.mxu0 0
  %11624 = vmatpush1.bf16.msra.mxu0 %v8857
  %11625 = vmatprep.subr.bf16.mxu0 0
  %11626 = vmatpush1.bf16.msra.mxu0 %v8858
  %11627 = vmatprep.mubr.bf16.mxu0 %v3070
  %11628 = vmatmul.mubr.bf16.gmra.mrb[0].mxu0 %v3069
  %v11629 = vpop.f32.mrb[0].mxu0
  %v11630 = vadd.f32 %v11590, %v11629
  %v11631 = vpop.f32.mrb[0].mxu0
  %v11632 = vpop.f32.mrb[0].mxu0
  %v11633 = vpop.f32.mrb[0].mxu0
  %11634 = vdwg.mxu0
  %11635 = vmatprep.subr.bf16.mxu0 0
  %11636 = vmatpush1.bf16.msra.mxu0 %v8859
  %11637 = vmatprep.subr.bf16.mxu0 0
  %11638 = vmatpush1.bf16.msra.mxu0 %v8860
  %11639 = vmatprep.subr.bf16.mxu0 0
  %11640 = vmatpush1.bf16.msra.mxu0 %v8861
  %11641 = vmatprep.subr.bf16.mxu0 0
  %11642 = vmatpush1.bf16.msra.mxu0 %v8862
  %11643 = vmatprep.subr.bf16.mxu0 0
  %11644 = vmatpush1.bf16.msra.mxu0 %v8863
  %11645 = vmatprep.subr.bf16.mxu0 0
  %11646 = vmatpush1.bf16.msra.mxu0 %v8864
  %11647 = vmatprep.subr.bf16.mxu0 0
  %11648 = vmatpush1.bf16.msra.mxu0 %v8865
  %11649 = vmatprep.subr.bf16.mxu0 0
  %11650 = vmatpush1.bf16.msra.mxu0 %v8866
  %11651 = vmatprep.subr.bf16.mxu0 0
  %11652 = vmatpush1.bf16.msra.mxu0 %v8867
  %11653 = vmatprep.subr.bf16.mxu0 0
  %11654 = vmatpush1.bf16.msra.mxu0 %v8868
  %11655 = vmatprep.subr.bf16.mxu0 0
  %11656 = vmatpush1.bf16.msra.mxu0 %v8869
  %11657 = vmatprep.subr.bf16.mxu0 0
  %11658 = vmatpush1.bf16.msra.mxu0 %v8870
  %11659 = vmatprep.subr.bf16.mxu0 0
  %11660 = vmatpush1.bf16.msra.mxu0 %v8871
  %11661 = vmatprep.subr.bf16.mxu0 0
  %11662 = vmatpush1.bf16.msra.mxu0 %v8872
  %11663 = vmatprep.subr.bf16.mxu0 0
  %11664 = vmatpush1.bf16.msra.mxu0 %v8873
  %11665 = vmatprep.subr.bf16.mxu0 0
  %11666 = vmatpush1.bf16.msra.mxu0 %v8874
  %11667 = vmatprep.mubr.bf16.mxu0 %v3072
  %11668 = vmatmul.mubr.bf16.gmra.mrb[0].mxu0 %v3071
  %v11669 = vpop.f32.mrb[0].mxu0
  %v11670 = vadd.f32 %v11630, %v11669
  %v11671 = vpop.f32.mrb[0].mxu0
  %v11672 = vpop.f32.mrb[0].mxu0
  %v11673 = vpop.f32.mrb[0].mxu0
  %11674 = vdwg.mxu0
  %11675 = vmatprep.subr.bf16.mxu0 0
  %11676 = vmatpush1.bf16.msra.mxu0 %v8875
  %11677 = vmatprep.subr.bf16.mxu0 0
  %11678 = vmatpush1.bf16.msra.mxu0 %v8876
  %11679 = vmatprep.subr.bf16.mxu0 0
  %11680 = vmatpush1.bf16.msra.mxu0 %v8877
  %11681 = vmatprep.subr.bf16.mxu0 0
  %11682 = vmatpush1.bf16.msra.mxu0 %v8878
  %11683 = vmatprep.subr.bf16.mxu0 0
  %11684 = vmatpush1.bf16.msra.mxu0 %v8879
  %11685 = vmatprep.subr.bf16.mxu0 0
  %11686 = vmatpush1.bf16.msra.mxu0 %v8880
  %11687 = vmatprep.subr.bf16.mxu0 0
  %11688 = vmatpush1.bf16.msra.mxu0 %v8881
  %11689 = vmatprep.subr.bf16.mxu0 0
  %11690 = vmatpush1.bf16.msra.mxu0 %v8882
  %11691 = vmatprep.subr.bf16.mxu0 0
  %11692 = vmatpush1.bf16.msra.mxu0 %v8883
  %11693 = vmatprep.subr.bf16.mxu0 0
  %11694 = vmatpush1.bf16.msra.mxu0 %v8884
  %11695 = vmatprep.subr.bf16.mxu0 0
  %11696 = vmatpush1.bf16.msra.mxu0 %v8885
  %11697 = vmatprep.subr.bf16.mxu0 0
  %11698 = vmatpush1.bf16.msra.mxu0 %v8886
  %11699 = vmatprep.subr.bf16.mxu0 0
  %11700 = vmatpush1.bf16.msra.mxu0 %v8887
  %11701 = vmatprep.subr.bf16.mxu0 0
  %11702 = vmatpush1.bf16.msra.mxu0 %v8888
  %11703 = vmatprep.subr.bf16.mxu0 0
  %11704 = vmatpush1.bf16.msra.mxu0 %v8889
  %11705 = vmatprep.subr.bf16.mxu0 0
  %11706 = vmatpush1.bf16.msra.mxu0 %v8890
  %11707 = vmatprep.mubr.bf16.mxu0 %v3074
  %11708 = vmatmul.mubr.bf16.gmra.mrb[0].mxu0 %v3073
  %v11709 = vpop.f32.mrb[0].mxu0
  %v11710 = vadd.f32 %v11670, %v11709
  %v11711 = vpop.f32.mrb[0].mxu0
  %v11712 = vpop.f32.mrb[0].mxu0
  %v11713 = vpop.f32.mrb[0].mxu0
  %11714 = vdwg.mxu0
  %11715 = vmatprep.subr.bf16.mxu0 0
  %11716 = vmatpush1.bf16.msra.mxu0 %v8891
  %11717 = vmatprep.subr.bf16.mxu0 0
  %11718 = vmatpush1.bf16.msra.mxu0 %v8892
  %11719 = vmatprep.subr.bf16.mxu0 0
  %11720 = vmatpush1.bf16.msra.mxu0 %v8893
  %11721 = vmatprep.subr.bf16.mxu0 0
  %11722 = vmatpush1.bf16.msra.mxu0 %v8894
  %11723 = vmatprep.subr.bf16.mxu0 0
  %11724 = vmatpush1.bf16.msra.mxu0 %v8895
  %11725 = vmatprep.subr.bf16.mxu0 0
  %11726 = vmatpush1.bf16.msra.mxu0 %v8896
  %11727 = vmatprep.subr.bf16.mxu0 0
  %11728 = vmatpush1.bf16.msra.mxu0 %v8897
  %11729 = vmatprep.subr.bf16.mxu0 0
  %11730 = vmatpush1.bf16.msra.mxu0 %v8898
  %11731 = vmatprep.subr.bf16.mxu0 0
  %11732 = vmatpush1.bf16.msra.mxu0 %v8899
  %11733 = vmatprep.subr.bf16.mxu0 0
  %11734 = vmatpush1.bf16.msra.mxu0 %v8900
  %11735 = vmatprep.subr.bf16.mxu0 0
  %11736 = vmatpush1.bf16.msra.mxu0 %v8901
  %11737 = vmatprep.subr.bf16.mxu0 0
  %11738 = vmatpush1.bf16.msra.mxu0 %v8902
  %11739 = vmatprep.subr.bf16.mxu0 0
  %11740 = vmatpush1.bf16.msra.mxu0 %v8903
  %11741 = vmatprep.subr.bf16.mxu0 0
  %11742 = vmatpush1.bf16.msra.mxu0 %v8904
  %11743 = vmatprep.subr.bf16.mxu0 0
  %11744 = vmatpush1.bf16.msra.mxu0 %v8905
  %11745 = vmatprep.subr.bf16.mxu0 0
  %11746 = vmatpush1.bf16.msra.mxu0 %v8906
  %11747 = vmatprep.mubr.bf16.mxu0 %v3076
  %11748 = vmatmul.mubr.bf16.gmra.mrb[0].mxu0 %v3075
  %v11749 = vpop.f32.mrb[0].mxu0
  %v11750 = vadd.f32 %v11710, %v11749
  %v11751 = vpop.f32.mrb[0].mxu0
  %v11752 = vpop.f32.mrb[0].mxu0
  %v11753 = vpop.f32.mrb[0].mxu0
  %11754 = vdwg.mxu0
  %11755 = vmatprep.subr.bf16.mxu0 0
  %11756 = vmatpush1.bf16.msra.mxu0 %v8907
  %11757 = vmatprep.subr.bf16.mxu0 0
  %11758 = vmatpush1.bf16.msra.mxu0 %v8908
  %11759 = vmatprep.subr.bf16.mxu0 0
  %11760 = vmatpush1.bf16.msra.mxu0 %v8909
  %11761 = vmatprep.subr.bf16.mxu0 0
  %11762 = vmatpush1.bf16.msra.mxu0 %v8910
  %11763 = vmatprep.subr.bf16.mxu0 0
  %11764 = vmatpush1.bf16.msra.mxu0 %v8911
  %11765 = vmatprep.subr.bf16.mxu0 0
  %11766 = vmatpush1.bf16.msra.mxu0 %v8912
  %11767 = vmatprep.subr.bf16.mxu0 0
  %11768 = vmatpush1.bf16.msra.mxu0 %v8913
  %11769 = vmatprep.subr.bf16.mxu0 0
  %11770 = vmatpush1.bf16.msra.mxu0 %v8914
  %11771 = vmatprep.subr.bf16.mxu0 0
  %11772 = vmatpush1.bf16.msra.mxu0 %v8915
  %11773 = vmatprep.subr.bf16.mxu0 0
  %11774 = vmatpush1.bf16.msra.mxu0 %v8916
  %11775 = vmatprep.subr.bf16.mxu0 0
  %11776 = vmatpush1.bf16.msra.mxu0 %v8917
  %11777 = vmatprep.subr.bf16.mxu0 0
  %11778 = vmatpush1.bf16.msra.mxu0 %v8918
  %11779 = vmatprep.subr.bf16.mxu0 0
  %11780 = vmatpush1.bf16.msra.mxu0 %v8919
  %11781 = vmatprep.subr.bf16.mxu0 0
  %11782 = vmatpush1.bf16.msra.mxu0 %v8920
  %11783 = vmatprep.subr.bf16.mxu0 0
  %11784 = vmatpush1.bf16.msra.mxu0 %v8921
  %11785 = vmatprep.subr.bf16.mxu0 0
  %11786 = vmatpush1.bf16.msra.mxu0 %v8922
  %11787 = vmatprep.mubr.bf16.mxu0 %v3078
  %11788 = vmatmul.mubr.bf16.gmra.mrb[0].mxu0 %v3077
  %v11789 = vpop.f32.mrb[0].mxu0
  %v11790 = vadd.f32 %v11750, %v11789
  %v11791 = vpop.f32.mrb[0].mxu0
  %v11792 = vpop.f32.mrb[0].mxu0
  %v11793 = vpop.f32.mrb[0].mxu0
  %11794 = vdwg.mxu0
  %11795 = vmatprep.subr.bf16.mxu0 0
  %11796 = vmatpush1.bf16.msra.mxu0 %v8923
  %11797 = vmatprep.subr.bf16.mxu0 0
  %11798 = vmatpush1.bf16.msra.mxu0 %v8924
  %11799 = vmatprep.subr.bf16.mxu0 0
  %11800 = vmatpush1.bf16.msra.mxu0 %v8925
  %11801 = vmatprep.subr.bf16.mxu0 0
  %11802 = vmatpush1.bf16.msra.mxu0 %v8926
  %11803 = vmatprep.subr.bf16.mxu0 0
  %11804 = vmatpush1.bf16.msra.mxu0 %v8927
  %11805 = vmatprep.subr.bf16.mxu0 0
  %11806 = vmatpush1.bf16.msra.mxu0 %v8928
  %11807 = vmatprep.subr.bf16.mxu0 0
  %11808 = vmatpush1.bf16.msra.mxu0 %v8929
  %11809 = vmatprep.subr.bf16.mxu0 0
  %11810 = vmatpush1.bf16.msra.mxu0 %v8930
  %11811 = vmatprep.subr.bf16.mxu0 0
  %11812 = vmatpush1.bf16.msra.mxu0 %v8931
  %11813 = vmatprep.subr.bf16.mxu0 0
  %11814 = vmatpush1.bf16.msra.mxu0 %v8932
  %11815 = vmatprep.subr.bf16.mxu0 0
  %11816 = vmatpush1.bf16.msra.mxu0 %v8933
  %11817 = vmatprep.subr.bf16.mxu0 0
  %11818 = vmatpush1.bf16.msra.mxu0 %v8934
  %11819 = vmatprep.subr.bf16.mxu0 0
  %11820 = vmatpush1.bf16.msra.mxu0 %v8935
  %11821 = vmatprep.subr.bf16.mxu0 0
  %11822 = vmatpush1.bf16.msra.mxu0 %v8936
  %11823 = vmatprep.subr.bf16.mxu0 0
  %11824 = vmatpush1.bf16.msra.mxu0 %v8937
  %11825 = vmatprep.subr.bf16.mxu0 0
  %11826 = vmatpush1.bf16.msra.mxu0 %v8938
  %11827 = vmatprep.mubr.bf16.mxu0 %v3080
  %11828 = vmatmul.mubr.bf16.gmra.mrb[0].mxu0 %v3079
  %v11829 = vpop.f32.mrb[0].mxu0
  %v11830 = vadd.f32 %v11790, %v11829
  %v11831 = vpop.f32.mrb[0].mxu0
  %v11832 = vpop.f32.mrb[0].mxu0
  %v11833 = vpop.f32.mrb[0].mxu0
  %11834 = vdwg.mxu0
  %11835 = vmatprep.subr.bf16.mxu0 0
  %11836 = vmatpush1.bf16.msra.mxu0 %v8939
  %11837 = vmatprep.subr.bf16.mxu0 0
  %11838 = vmatpush1.bf16.msra.mxu0 %v8940
  %11839 = vmatprep.subr.bf16.mxu0 0
  %11840 = vmatpush1.bf16.msra.mxu0 %v8941
  %11841 = vmatprep.subr.bf16.mxu0 0
  %11842 = vmatpush1.bf16.msra.mxu0 %v8942
  %11843 = vmatprep.subr.bf16.mxu0 0
  %11844 = vmatpush1.bf16.msra.mxu0 %v8943
  %11845 = vmatprep.subr.bf16.mxu0 0
  %11846 = vmatpush1.bf16.msra.mxu0 %v8944
  %11847 = vmatprep.subr.bf16.mxu0 0
  %11848 = vmatpush1.bf16.msra.mxu0 %v8945
  %11849 = vmatprep.subr.bf16.mxu0 0
  %11850 = vmatpush1.bf16.msra.mxu0 %v8946
  %11851 = vmatprep.subr.bf16.mxu0 0
  %11852 = vmatpush1.bf16.msra.mxu0 %v8947
  %11853 = vmatprep.subr.bf16.mxu0 0
  %11854 = vmatpush1.bf16.msra.mxu0 %v8948
  %11855 = vmatprep.subr.bf16.mxu0 0
  %11856 = vmatpush1.bf16.msra.mxu0 %v8949
  %11857 = vmatprep.subr.bf16.mxu0 0
  %11858 = vmatpush1.bf16.msra.mxu0 %v8950
  %11859 = vmatprep.subr.bf16.mxu0 0
  %11860 = vmatpush1.bf16.msra.mxu0 %v8951
  %11861 = vmatprep.subr.bf16.mxu0 0
  %11862 = vmatpush1.bf16.msra.mxu0 %v8952
  %11863 = vmatprep.subr.bf16.mxu0 0
  %11864 = vmatpush1.bf16.msra.mxu0 %v8953
  %11865 = vmatprep.subr.bf16.mxu0 0
  %11866 = vmatpush1.bf16.msra.mxu0 %v8954
  %11867 = vmatprep.mubr.bf16.mxu0 %v3082
  %11868 = vmatmul.mubr.bf16.gmra.mrb[0].mxu0 %v3081
  %v11869 = vpop.f32.mrb[0].mxu0
  %v11870 = vadd.f32 %v11830, %v11869
  %v11871 = vpop.f32.mrb[0].mxu0
  %v11872 = vpop.f32.mrb[0].mxu0
  %v11873 = vpop.f32.mrb[0].mxu0
  %11874 = vdwg.mxu0
  %11875 = vmatprep.subr.bf16.mxu0 0
  %11876 = vmatpush1.bf16.msra.mxu0 %v8955
  %11877 = vmatprep.subr.bf16.mxu0 0
  %11878 = vmatpush1.bf16.msra.mxu0 %v8956
  %11879 = vmatprep.subr.bf16.mxu0 0
  %11880 = vmatpush1.bf16.msra.mxu0 %v8957
  %11881 = vmatprep.subr.bf16.mxu0 0
  %11882 = vmatpush1.bf16.msra.mxu0 %v8958
  %11883 = vmatprep.subr.bf16.mxu0 0
  %11884 = vmatpush1.bf16.msra.mxu0 %v8959
  %11885 = vmatprep.subr.bf16.mxu0 0
  %11886 = vmatpush1.bf16.msra.mxu0 %v8960
  %11887 = vmatprep.subr.bf16.mxu0 0
  %11888 = vmatpush1.bf16.msra.mxu0 %v8961
  %11889 = vmatprep.subr.bf16.mxu0 0
  %11890 = vmatpush1.bf16.msra.mxu0 %v8962
  %11891 = vmatprep.subr.bf16.mxu0 0
  %11892 = vmatpush1.bf16.msra.mxu0 %v8963
  %11893 = vmatprep.subr.bf16.mxu0 0
  %11894 = vmatpush1.bf16.msra.mxu0 %v8964
  %11895 = vmatprep.subr.bf16.mxu0 0
  %11896 = vmatpush1.bf16.msra.mxu0 %v8965
  %11897 = vmatprep.subr.bf16.mxu0 0
  %11898 = vmatpush1.bf16.msra.mxu0 %v8966
  %11899 = vmatprep.subr.bf16.mxu0 0
  %11900 = vmatpush1.bf16.msra.mxu0 %v8967
  %11901 = vmatprep.subr.bf16.mxu0 0
  %11902 = vmatpush1.bf16.msra.mxu0 %v8968
  %11903 = vmatprep.subr.bf16.mxu0 0
  %11904 = vmatpush1.bf16.msra.mxu0 %v8969
  %11905 = vmatprep.subr.bf16.mxu0 0
  %11906 = vmatpush1.bf16.msra.mxu0 %v8970
  %11907 = vmatprep.mubr.bf16.mxu0 %v3084
  %11908 = vmatmul.mubr.bf16.gmra.mrb[0].mxu0 %v3083
  %v11909 = vpop.f32.mrb[0].mxu0
  %v11910 = vadd.f32 %v11870, %v11909
  %v11911 = vpop.f32.mrb[0].mxu0
  %v11912 = vpop.f32.mrb[0].mxu0
  %v11913 = vpop.f32.mrb[0].mxu0
  %11914 = vdwg.mxu0
  %11915 = vmatprep.subr.bf16.mxu0 0
  %11916 = vmatpush1.bf16.msra.mxu0 %v8971
  %11917 = vmatprep.subr.bf16.mxu0 0
  %11918 = vmatpush1.bf16.msra.mxu0 %v8972
  %11919 = vmatprep.subr.bf16.mxu0 0
  %11920 = vmatpush1.bf16.msra.mxu0 %v8973
  %11921 = vmatprep.subr.bf16.mxu0 0
  %11922 = vmatpush1.bf16.msra.mxu0 %v8974
  %11923 = vmatprep.subr.bf16.mxu0 0
  %11924 = vmatpush1.bf16.msra.mxu0 %v8975
  %11925 = vmatprep.subr.bf16.mxu0 0
  %11926 = vmatpush1.bf16.msra.mxu0 %v8976
  %11927 = vmatprep.subr.bf16.mxu0 0
  %11928 = vmatpush1.bf16.msra.mxu0 %v8977
  %11929 = vmatprep.subr.bf16.mxu0 0
  %11930 = vmatpush1.bf16.msra.mxu0 %v8978
  %11931 = vmatprep.subr.bf16.mxu0 0
  %11932 = vmatpush1.bf16.msra.mxu0 %v8979
  %11933 = vmatprep.subr.bf16.mxu0 0
  %11934 = vmatpush1.bf16.msra.mxu0 %v8980
  %11935 = vmatprep.subr.bf16.mxu0 0
  %11936 = vmatpush1.bf16.msra.mxu0 %v8981
  %11937 = vmatprep.subr.bf16.mxu0 0
  %11938 = vmatpush1.bf16.msra.mxu0 %v8982
  %11939 = vmatprep.subr.bf16.mxu0 0
  %11940 = vmatpush1.bf16.msra.mxu0 %v8983
  %11941 = vmatprep.subr.bf16.mxu0 0
  %11942 = vmatpush1.bf16.msra.mxu0 %v8984
  %11943 = vmatprep.subr.bf16.mxu0 0
  %11944 = vmatpush1.bf16.msra.mxu0 %v8985
  %11945 = vmatprep.subr.bf16.mxu0 0
  %11946 = vmatpush1.bf16.msra.mxu0 %v8986
  %11947 = vmatprep.mubr.bf16.mxu0 %v3086
  %11948 = vmatmul.mubr.bf16.gmra.mrb[0].mxu0 %v3085
  %v11949 = vpop.f32.mrb[0].mxu0
  %v11950 = vadd.f32 %v11910, %v11949
  %v11951 = vpop.f32.mrb[0].mxu0
  %v11952 = vpop.f32.mrb[0].mxu0
  %v11953 = vpop.f32.mrb[0].mxu0
  %11954 = vdwg.mxu0
  %11955 = vmatprep.subr.bf16.mxu0 0
  %11956 = vmatpush1.bf16.msra.mxu0 %v8987
  %11957 = vmatprep.subr.bf16.mxu0 0
  %11958 = vmatpush1.bf16.msra.mxu0 %v8988
  %11959 = vmatprep.subr.bf16.mxu0 0
  %11960 = vmatpush1.bf16.msra.mxu0 %v8989
  %11961 = vmatprep.subr.bf16.mxu0 0
  %11962 = vmatpush1.bf16.msra.mxu0 %v8990
  %11963 = vmatprep.subr.bf16.mxu0 0
  %11964 = vmatpush1.bf16.msra.mxu0 %v8991
  %11965 = vmatprep.subr.bf16.mxu0 0
  %11966 = vmatpush1.bf16.msra.mxu0 %v8992
  %11967 = vmatprep.subr.bf16.mxu0 0
  %11968 = vmatpush1.bf16.msra.mxu0 %v8993
  %11969 = vmatprep.subr.bf16.mxu0 0
  %11970 = vmatpush1.bf16.msra.mxu0 %v8994
  %11971 = vmatprep.subr.bf16.mxu0 0
  %11972 = vmatpush1.bf16.msra.mxu0 %v8995
  %11973 = vmatprep.subr.bf16.mxu0 0
  %11974 = vmatpush1.bf16.msra.mxu0 %v8996
  %11975 = vmatprep.subr.bf16.mxu0 0
  %11976 = vmatpush1.bf16.msra.mxu0 %v8997
  %11977 = vmatprep.subr.bf16.mxu0 0
  %11978 = vmatpush1.bf16.msra.mxu0 %v8998
  %11979 = vmatprep.subr.bf16.mxu0 0
  %11980 = vmatpush1.bf16.msra.mxu0 %v8999
  %11981 = vmatprep.subr.bf16.mxu0 0
  %11982 = vmatpush1.bf16.msra.mxu0 %v9000
  %11983 = vmatprep.subr.bf16.mxu0 0
  %11984 = vmatpush1.bf16.msra.mxu0 %v9001
  %11985 = vmatprep.subr.bf16.mxu0 0
  %11986 = vmatpush1.bf16.msra.mxu0 %v9002
  %11987 = vmatprep.mubr.bf16.mxu0 %v3088
  %11988 = vmatmul.mubr.bf16.gmra.mrb[0].mxu0 %v3087
  %v11989 = vpop.f32.mrb[0].mxu0
  %v11990 = vadd.f32 %v11950, %v11989
  %v11991 = vpop.f32.mrb[0].mxu0
  %v11992 = vpop.f32.mrb[0].mxu0
  %v11993 = vpop.f32.mrb[0].mxu0
  %11994 = vdwg.mxu0
  %11995 = vmatprep.subr.bf16.mxu0 0
  %11996 = vmatpush1.bf16.msra.mxu0 %v9003
  %11997 = vmatprep.subr.bf16.mxu0 0
  %11998 = vmatpush1.bf16.msra.mxu0 %v9004
  %11999 = vmatprep.subr.bf16.mxu0 0
  %12000 = vmatpush1.bf16.msra.mxu0 %v9005
  %12001 = vmatprep.subr.bf16.mxu0 0
  %12002 = vmatpush1.bf16.msra.mxu0 %v9006
  %12003 = vmatprep.subr.bf16.mxu0 0
  %12004 = vmatpush1.bf16.msra.mxu0 %v9007
  %12005 = vmatprep.subr.bf16.mxu0 0
  %12006 = vmatpush1.bf16.msra.mxu0 %v9008
  %12007 = vmatprep.subr.bf16.mxu0 0
  %12008 = vmatpush1.bf16.msra.mxu0 %v9009
  %12009 = vmatprep.subr.bf16.mxu0 0
  %12010 = vmatpush1.bf16.msra.mxu0 %v9010
  %12011 = vmatprep.subr.bf16.mxu0 0
  %12012 = vmatpush1.bf16.msra.mxu0 %v9011
  %12013 = vmatprep.subr.bf16.mxu0 0
  %12014 = vmatpush1.bf16.msra.mxu0 %v9012
  %12015 = vmatprep.subr.bf16.mxu0 0
  %12016 = vmatpush1.bf16.msra.mxu0 %v9013
  %12017 = vmatprep.subr.bf16.mxu0 0
  %12018 = vmatpush1.bf16.msra.mxu0 %v9014
  %12019 = vmatprep.subr.bf16.mxu0 0
  %12020 = vmatpush1.bf16.msra.mxu0 %v9015
  %12021 = vmatprep.subr.bf16.mxu0 0
  %12022 = vmatpush1.bf16.msra.mxu0 %v9016
  %12023 = vmatprep.subr.bf16.mxu0 0
  %12024 = vmatpush1.bf16.msra.mxu0 %v9017
  %12025 = vmatprep.subr.bf16.mxu0 0
  %12026 = vmatpush1.bf16.msra.mxu0 %v9018
  %12027 = vmatprep.mubr.bf16.mxu0 %v3090
  %12028 = vmatmul.mubr.bf16.gmra.mrb[0].mxu0 %v3089
  %v12029 = vpop.f32.mrb[0].mxu0
  %v12030 = vadd.f32 %v11990, %v12029
  %v12031 = vpop.f32.mrb[0].mxu0
  %v12032 = vpop.f32.mrb[0].mxu0
  %v12033 = vpop.f32.mrb[0].mxu0
  %12034 = vdwg.mxu0
  %12035 = vmatprep.subr.bf16.mxu0 0
  %12036 = vmatpush1.bf16.msra.mxu0 %v9019
  %12037 = vmatprep.subr.bf16.mxu0 0
  %12038 = vmatpush1.bf16.msra.mxu0 %v9020
  %12039 = vmatprep.subr.bf16.mxu0 0
  %12040 = vmatpush1.bf16.msra.mxu0 %v9021
  %12041 = vmatprep.subr.bf16.mxu0 0
  %12042 = vmatpush1.bf16.msra.mxu0 %v9022
  %12043 = vmatprep.subr.bf16.mxu0 0
  %12044 = vmatpush1.bf16.msra.mxu0 %v9023
  %12045 = vmatprep.subr.bf16.mxu0 0
  %12046 = vmatpush1.bf16.msra.mxu0 %v9024
  %12047 = vmatprep.subr.bf16.mxu0 0
  %12048 = vmatpush1.bf16.msra.mxu0 %v9025
  %12049 = vmatprep.subr.bf16.mxu0 0
  %12050 = vmatpush1.bf16.msra.mxu0 %v9026
  %12051 = vmatprep.subr.bf16.mxu0 0
  %12052 = vmatpush1.bf16.msra.mxu0 %v9027
  %12053 = vmatprep.subr.bf16.mxu0 0
  %12054 = vmatpush1.bf16.msra.mxu0 %v9028
  %12055 = vmatprep.subr.bf16.mxu0 0
  %12056 = vmatpush1.bf16.msra.mxu0 %v9029
  %12057 = vmatprep.subr.bf16.mxu0 0
  %12058 = vmatpush1.bf16.msra.mxu0 %v9030
  %12059 = vmatprep.subr.bf16.mxu0 0
  %12060 = vmatpush1.bf16.msra.mxu0 %v9031
  %12061 = vmatprep.subr.bf16.mxu0 0
  %12062 = vmatpush1.bf16.msra.mxu0 %v9032
  %12063 = vmatprep.subr.bf16.mxu0 0
  %12064 = vmatpush1.bf16.msra.mxu0 %v9033
  %12065 = vmatprep.subr.bf16.mxu0 0
  %12066 = vmatpush1.bf16.msra.mxu0 %v9034
  %12067 = vmatprep.mubr.bf16.mxu0 %v3092
  %12068 = vmatmul.mubr.bf16.gmra.mrb[0].mxu0 %v3091
  %v12069 = vpop.f32.mrb[0].mxu0
  %v12070 = vadd.f32 %v12030, %v12069
  %v12071 = vpop.f32.mrb[0].mxu0
  %v12072 = vpop.f32.mrb[0].mxu0
  %v12073 = vpop.f32.mrb[0].mxu0
  %12074 = vdwg.mxu0
  %12075 = vmatprep.subr.bf16.mxu0 0
  %12076 = vmatpush1.bf16.msra.mxu0 %v9035
  %12077 = vmatprep.subr.bf16.mxu0 0
  %12078 = vmatpush1.bf16.msra.mxu0 %v9036
  %12079 = vmatprep.subr.bf16.mxu0 0
  %12080 = vmatpush1.bf16.msra.mxu0 %v9037
  %12081 = vmatprep.subr.bf16.mxu0 0
  %12082 = vmatpush1.bf16.msra.mxu0 %v9038
  %12083 = vmatprep.subr.bf16.mxu0 0
  %12084 = vmatpush1.bf16.msra.mxu0 %v9039
  %12085 = vmatprep.subr.bf16.mxu0 0
  %12086 = vmatpush1.bf16.msra.mxu0 %v9040
  %12087 = vmatprep.subr.bf16.mxu0 0
  %12088 = vmatpush1.bf16.msra.mxu0 %v9041
  %12089 = vmatprep.subr.bf16.mxu0 0
  %12090 = vmatpush1.bf16.msra.mxu0 %v9042
  %12091 = vmatprep.subr.bf16.mxu0 0
  %12092 = vmatpush1.bf16.msra.mxu0 %v9043
  %12093 = vmatprep.subr.bf16.mxu0 0
  %12094 = vmatpush1.bf16.msra.mxu0 %v9044
  %12095 = vmatprep.subr.bf16.mxu0 0
  %12096 = vmatpush1.bf16.msra.mxu0 %v9045
  %12097 = vmatprep.subr.bf16.mxu0 0
  %12098 = vmatpush1.bf16.msra.mxu0 %v9046
  %12099 = vmatprep.subr.bf16.mxu0 0
  %12100 = vmatpush1.bf16.msra.mxu0 %v9047
  %12101 = vmatprep.subr.bf16.mxu0 0
  %12102 = vmatpush1.bf16.msra.mxu0 %v9048
  %12103 = vmatprep.subr.bf16.mxu0 0
  %12104 = vmatpush1.bf16.msra.mxu0 %v9049
  %12105 = vmatprep.subr.bf16.mxu0 0
  %12106 = vmatpush1.bf16.msra.mxu0 %v9050
  %12107 = vmatprep.mubr.bf16.mxu0 %v3094
  %12108 = vmatmul.mubr.bf16.gmra.mrb[0].mxu0 %v3093
  %v12109 = vpop.f32.mrb[0].mxu0
  %v12110 = vadd.f32 %v12070, %v12109
  %v12111 = vpop.f32.mrb[0].mxu0
  %v12112 = vpop.f32.mrb[0].mxu0
  %v12113 = vpop.f32.mrb[0].mxu0
  %12114 = vdwg.mxu0
  %12115 = vmatprep.subr.bf16.mxu0 0
  %12116 = vmatpush1.bf16.msra.mxu0 %v9051
  %12117 = vmatprep.subr.bf16.mxu0 0
  %12118 = vmatpush1.bf16.msra.mxu0 %v9052
  %12119 = vmatprep.subr.bf16.mxu0 0
  %12120 = vmatpush1.bf16.msra.mxu0 %v9053
  %12121 = vmatprep.subr.bf16.mxu0 0
  %12122 = vmatpush1.bf16.msra.mxu0 %v9054
  %12123 = vmatprep.subr.bf16.mxu0 0
  %12124 = vmatpush1.bf16.msra.mxu0 %v9055
  %12125 = vmatprep.subr.bf16.mxu0 0
  %12126 = vmatpush1.bf16.msra.mxu0 %v9056
  %12127 = vmatprep.subr.bf16.mxu0 0
  %12128 = vmatpush1.bf16.msra.mxu0 %v9057
  %12129 = vmatprep.subr.bf16.mxu0 0
  %12130 = vmatpush1.bf16.msra.mxu0 %v9058
  %12131 = vmatprep.subr.bf16.mxu0 0
  %12132 = vmatpush1.bf16.msra.mxu0 %v9059
  %12133 = vmatprep.subr.bf16.mxu0 0
  %12134 = vmatpush1.bf16.msra.mxu0 %v9060
  %12135 = vmatprep.subr.bf16.mxu0 0
  %12136 = vmatpush1.bf16.msra.mxu0 %v9061
  %12137 = vmatprep.subr.bf16.mxu0 0
  %12138 = vmatpush1.bf16.msra.mxu0 %v9062
  %12139 = vmatprep.subr.bf16.mxu0 0
  %12140 = vmatpush1.bf16.msra.mxu0 %v9063
  %12141 = vmatprep.subr.bf16.mxu0 0
  %12142 = vmatpush1.bf16.msra.mxu0 %v9064
  %12143 = vmatprep.subr.bf16.mxu0 0
  %12144 = vmatpush1.bf16.msra.mxu0 %v9065
  %12145 = vmatprep.subr.bf16.mxu0 0
  %12146 = vmatpush1.bf16.msra.mxu0 %v9066
  %12147 = vmatprep.mubr.bf16.mxu0 %v3096
  %12148 = vmatmul.mubr.bf16.gmra.mrb[0].mxu0 %v3095
  %v12149 = vpop.f32.mrb[0].mxu0
  %v12150 = vadd.f32 %v12110, %v12149
  %v12151 = vpop.f32.mrb[0].mxu0
  %v12152 = vpop.f32.mrb[0].mxu0
  %v12153 = vpop.f32.mrb[0].mxu0
  %12154 = vdwg.mxu0
  %12155 = vmatprep.subr.bf16.mxu0 0
  %12156 = vmatpush1.bf16.msra.mxu0 %v9067
  %12157 = vmatprep.subr.bf16.mxu0 0
  %12158 = vmatpush1.bf16.msra.mxu0 %v9068
  %12159 = vmatprep.subr.bf16.mxu0 0
  %12160 = vmatpush1.bf16.msra.mxu0 %v9069
  %12161 = vmatprep.subr.bf16.mxu0 0
  %12162 = vmatpush1.bf16.msra.mxu0 %v9070
  %12163 = vmatprep.subr.bf16.mxu0 0
  %12164 = vmatpush1.bf16.msra.mxu0 %v9071
  %12165 = vmatprep.subr.bf16.mxu0 0
  %12166 = vmatpush1.bf16.msra.mxu0 %v9072
  %12167 = vmatprep.subr.bf16.mxu0 0
  %12168 = vmatpush1.bf16.msra.mxu0 %v9073
  %12169 = vmatprep.subr.bf16.mxu0 0
  %12170 = vmatpush1.bf16.msra.mxu0 %v9074
  %12171 = vmatprep.subr.bf16.mxu0 0
  %12172 = vmatpush1.bf16.msra.mxu0 %v9075
  %12173 = vmatprep.subr.bf16.mxu0 0
  %12174 = vmatpush1.bf16.msra.mxu0 %v9076
  %12175 = vmatprep.subr.bf16.mxu0 0
  %12176 = vmatpush1.bf16.msra.mxu0 %v9077
  %12177 = vmatprep.subr.bf16.mxu0 0
  %12178 = vmatpush1.bf16.msra.mxu0 %v9078
  %12179 = vmatprep.subr.bf16.mxu0 0
  %12180 = vmatpush1.bf16.msra.mxu0 %v9079
  %12181 = vmatprep.subr.bf16.mxu0 0
  %12182 = vmatpush1.bf16.msra.mxu0 %v9080
  %12183 = vmatprep.subr.bf16.mxu0 0
  %12184 = vmatpush1.bf16.msra.mxu0 %v9081
  %12185 = vmatprep.subr.bf16.mxu0 0
  %12186 = vmatpush1.bf16.msra.mxu0 %v9082
  %12187 = vmatprep.mubr.bf16.mxu0 %v3098
  %12188 = vmatmul.mubr.bf16.gmra.mrb[0].mxu0 %v3097
  %v12189 = vpop.f32.mrb[0].mxu0
  %v12190 = vadd.f32 %v12150, %v12189
  %v12191 = vpop.f32.mrb[0].mxu0
  %v12192 = vpop.f32.mrb[0].mxu0
  %v12193 = vpop.f32.mrb[0].mxu0
  %12194 = vdwg.mxu0
  %12195 = vmatprep.subr.bf16.mxu0 0
  %12196 = vmatpush1.bf16.msra.mxu0 %v9083
  %12197 = vmatprep.subr.bf16.mxu0 0
  %12198 = vmatpush1.bf16.msra.mxu0 %v9084
  %12199 = vmatprep.subr.bf16.mxu0 0
  %12200 = vmatpush1.bf16.msra.mxu0 %v9085
  %12201 = vmatprep.subr.bf16.mxu0 0
  %12202 = vmatpush1.bf16.msra.mxu0 %v9086
  %12203 = vmatprep.subr.bf16.mxu0 0
  %12204 = vmatpush1.bf16.msra.mxu0 %v9087
  %12205 = vmatprep.subr.bf16.mxu0 0
  %12206 = vmatpush1.bf16.msra.mxu0 %v9088
  %12207 = vmatprep.subr.bf16.mxu0 0
  %12208 = vmatpush1.bf16.msra.mxu0 %v9089
  %12209 = vmatprep.subr.bf16.mxu0 0
  %12210 = vmatpush1.bf16.msra.mxu0 %v9090
  %12211 = vmatprep.subr.bf16.mxu0 0
  %12212 = vmatpush1.bf16.msra.mxu0 %v9091
  %12213 = vmatprep.subr.bf16.mxu0 0
  %12214 = vmatpush1.bf16.msra.mxu0 %v9092
  %12215 = vmatprep.subr.bf16.mxu0 0
  %12216 = vmatpush1.bf16.msra.mxu0 %v9093
  %12217 = vmatprep.subr.bf16.mxu0 0
  %12218 = vmatpush1.bf16.msra.mxu0 %v9094
  %12219 = vmatprep.subr.bf16.mxu0 0
  %12220 = vmatpush1.bf16.msra.mxu0 %v9095
  %12221 = vmatprep.subr.bf16.mxu0 0
  %12222 = vmatpush1.bf16.msra.mxu0 %v9096
  %12223 = vmatprep.subr.bf16.mxu0 0
  %12224 = vmatpush1.bf16.msra.mxu0 %v9097
  %12225 = vmatprep.subr.bf16.mxu0 0
  %12226 = vmatpush1.bf16.msra.mxu0 %v9098
  %12227 = vmatprep.mubr.bf16.mxu0 %v3100
  %12228 = vmatmul.mubr.bf16.gmra.mrb[0].mxu0 %v3099
  %v12229 = vpop.f32.mrb[0].mxu0
  %v12230 = vadd.f32 %v12190, %v12229
  %v12231 = vpop.f32.mrb[0].mxu0
  %v12232 = vpop.f32.mrb[0].mxu0
  %v12233 = vpop.f32.mrb[0].mxu0
  %12234 = vdwg.mxu0
  %12235 = vmatprep.subr.bf16.mxu0 0
  %12236 = vmatpush1.bf16.msra.mxu0 %v9099
  %12237 = vmatprep.subr.bf16.mxu0 0
  %12238 = vmatpush1.bf16.msra.mxu0 %v9100
  %12239 = vmatprep.subr.bf16.mxu0 0
  %12240 = vmatpush1.bf16.msra.mxu0 %v9101
  %12241 = vmatprep.subr.bf16.mxu0 0
  %12242 = vmatpush1.bf16.msra.mxu0 %v9102
  %12243 = vmatprep.subr.bf16.mxu0 0
  %12244 = vmatpush1.bf16.msra.mxu0 %v9103
  %12245 = vmatprep.subr.bf16.mxu0 0
  %12246 = vmatpush1.bf16.msra.mxu0 %v9104
  %12247 = vmatprep.subr.bf16.mxu0 0
  %12248 = vmatpush1.bf16.msra.mxu0 %v9105
  %12249 = vmatprep.subr.bf16.mxu0 0
  %12250 = vmatpush1.bf16.msra.mxu0 %v9106
  %12251 = vmatprep.subr.bf16.mxu0 0
  %12252 = vmatpush1.bf16.msra.mxu0 %v9107
  %12253 = vmatprep.subr.bf16.mxu0 0
  %12254 = vmatpush1.bf16.msra.mxu0 %v9108
  %12255 = vmatprep.subr.bf16.mxu0 0
  %12256 = vmatpush1.bf16.msra.mxu0 %v9109
  %12257 = vmatprep.subr.bf16.mxu0 0
  %12258 = vmatpush1.bf16.msra.mxu0 %v9110
  %12259 = vmatprep.subr.bf16.mxu0 0
  %12260 = vmatpush1.bf16.msra.mxu0 %v9111
  %12261 = vmatprep.subr.bf16.mxu0 0
  %12262 = vmatpush1.bf16.msra.mxu0 %v9112
  %12263 = vmatprep.subr.bf16.mxu0 0
  %12264 = vmatpush1.bf16.msra.mxu0 %v9113
  %12265 = vmatprep.subr.bf16.mxu0 0
  %12266 = vmatpush1.bf16.msra.mxu0 %v9114
  %12267 = vmatprep.mubr.bf16.mxu0 %v3102
  %12268 = vmatmul.mubr.bf16.gmra.mrb[0].mxu0 %v3101
  %v12269 = vpop.f32.mrb[0].mxu0
  %v12270 = vadd.f32 %v12230, %v12269
  %v12271 = vpop.f32.mrb[0].mxu0
  %v12272 = vpop.f32.mrb[0].mxu0
  %v12273 = vpop.f32.mrb[0].mxu0
  %12274 = vdwg.mxu0
  %12275 = vmatprep.subr.bf16.mxu0 0
  %12276 = vmatpush1.bf16.msra.mxu0 %v9115
  %12277 = vmatprep.subr.bf16.mxu0 0
  %12278 = vmatpush1.bf16.msra.mxu0 %v9116
  %12279 = vmatprep.subr.bf16.mxu0 0
  %12280 = vmatpush1.bf16.msra.mxu0 %v9117
  %12281 = vmatprep.subr.bf16.mxu0 0
  %12282 = vmatpush1.bf16.msra.mxu0 %v9118
  %12283 = vmatprep.subr.bf16.mxu0 0
  %12284 = vmatpush1.bf16.msra.mxu0 %v9119
  %12285 = vmatprep.subr.bf16.mxu0 0
  %12286 = vmatpush1.bf16.msra.mxu0 %v9120
  %12287 = vmatprep.subr.bf16.mxu0 0
  %12288 = vmatpush1.bf16.msra.mxu0 %v9121
  %12289 = vmatprep.subr.bf16.mxu0 0
  %12290 = vmatpush1.bf16.msra.mxu0 %v9122
  %12291 = vmatprep.subr.bf16.mxu0 0
  %12292 = vmatpush1.bf16.msra.mxu0 %v9123
  %12293 = vmatprep.subr.bf16.mxu0 0
  %12294 = vmatpush1.bf16.msra.mxu0 %v9124
  %12295 = vmatprep.subr.bf16.mxu0 0
  %12296 = vmatpush1.bf16.msra.mxu0 %v9125
  %12297 = vmatprep.subr.bf16.mxu0 0
  %12298 = vmatpush1.bf16.msra.mxu0 %v9126
  %12299 = vmatprep.subr.bf16.mxu0 0
  %12300 = vmatpush1.bf16.msra.mxu0 %v9127
  %12301 = vmatprep.subr.bf16.mxu0 0
  %12302 = vmatpush1.bf16.msra.mxu0 %v9128
  %12303 = vmatprep.subr.bf16.mxu0 0
  %12304 = vmatpush1.bf16.msra.mxu0 %v9129
  %12305 = vmatprep.subr.bf16.mxu0 0
  %12306 = vmatpush1.bf16.msra.mxu0 %v9130
  %12307 = vmatprep.mubr.bf16.mxu0 %v3104
  %12308 = vmatmul.mubr.bf16.gmra.mrb[0].mxu0 %v3103
  %v12309 = vpop.f32.mrb[0].mxu0
  %v12310 = vadd.f32 %v12270, %v12309
  %v12311 = vpop.f32.mrb[0].mxu0
  %v12312 = vpop.f32.mrb[0].mxu0
  %v12313 = vpop.f32.mrb[0].mxu0
  %12314 = vdwg.mxu0
  %12315 = vmatprep.subr.bf16.mxu0 0
  %12316 = vmatpush1.bf16.msra.mxu0 %v9131
  %12317 = vmatprep.subr.bf16.mxu0 0
  %12318 = vmatpush1.bf16.msra.mxu0 %v9132
  %12319 = vmatprep.subr.bf16.mxu0 0
  %12320 = vmatpush1.bf16.msra.mxu0 %v9133
  %12321 = vmatprep.subr.bf16.mxu0 0
  %12322 = vmatpush1.bf16.msra.mxu0 %v9134
  %12323 = vmatprep.subr.bf16.mxu0 0
  %12324 = vmatpush1.bf16.msra.mxu0 %v9135
  %12325 = vmatprep.subr.bf16.mxu0 0
  %12326 = vmatpush1.bf16.msra.mxu0 %v9136
  %12327 = vmatprep.subr.bf16.mxu0 0
  %12328 = vmatpush1.bf16.msra.mxu0 %v9137
  %12329 = vmatprep.subr.bf16.mxu0 0
  %12330 = vmatpush1.bf16.msra.mxu0 %v9138
  %12331 = vmatprep.subr.bf16.mxu0 0
  %12332 = vmatpush1.bf16.msra.mxu0 %v9139
  %12333 = vmatprep.subr.bf16.mxu0 0
  %12334 = vmatpush1.bf16.msra.mxu0 %v9140
  %12335 = vmatprep.subr.bf16.mxu0 0
  %12336 = vmatpush1.bf16.msra.mxu0 %v9141
  %12337 = vmatprep.subr.bf16.mxu0 0
  %12338 = vmatpush1.bf16.msra.mxu0 %v9142
  %12339 = vmatprep.subr.bf16.mxu0 0
  %12340 = vmatpush1.bf16.msra.mxu0 %v9143
  %12341 = vmatprep.subr.bf16.mxu0 0
  %12342 = vmatpush1.bf16.msra.mxu0 %v9144
  %12343 = vmatprep.subr.bf16.mxu0 0
  %12344 = vmatpush1.bf16.msra.mxu0 %v9145
  %12345 = vmatprep.subr.bf16.mxu0 0
  %12346 = vmatpush1.bf16.msra.mxu0 %v9146
  %12347 = vmatprep.mubr.bf16.mxu0 %v3106
  %12348 = vmatmul.mubr.bf16.gmra.mrb[0].mxu0 %v3105
  %v12349 = vpop.f32.mrb[0].mxu0
  %v12350 = vadd.f32 %v12310, %v12349
  %v12351 = vpop.f32.mrb[0].mxu0
  %v12352 = vpop.f32.mrb[0].mxu0
  %v12353 = vpop.f32.mrb[0].mxu0
  %12354 = vdwg.mxu0
  %12355 = vmatprep.subr.bf16.mxu0 0
  %12356 = vmatpush1.bf16.msra.mxu0 %v9147
  %12357 = vmatprep.subr.bf16.mxu0 0
  %12358 = vmatpush1.bf16.msra.mxu0 %v9148
  %12359 = vmatprep.subr.bf16.mxu0 0
  %12360 = vmatpush1.bf16.msra.mxu0 %v9149
  %12361 = vmatprep.subr.bf16.mxu0 0
  %12362 = vmatpush1.bf16.msra.mxu0 %v9150
  %12363 = vmatprep.subr.bf16.mxu0 0
  %12364 = vmatpush1.bf16.msra.mxu0 %v9151
  %12365 = vmatprep.subr.bf16.mxu0 0
  %12366 = vmatpush1.bf16.msra.mxu0 %v9152
  %12367 = vmatprep.subr.bf16.mxu0 0
  %12368 = vmatpush1.bf16.msra.mxu0 %v9153
  %12369 = vmatprep.subr.bf16.mxu0 0
  %12370 = vmatpush1.bf16.msra.mxu0 %v9154
  %12371 = vmatprep.subr.bf16.mxu0 0
  %12372 = vmatpush1.bf16.msra.mxu0 %v9155
  %12373 = vmatprep.subr.bf16.mxu0 0
  %12374 = vmatpush1.bf16.msra.mxu0 %v9156
  %12375 = vmatprep.subr.bf16.mxu0 0
  %12376 = vmatpush1.bf16.msra.mxu0 %v9157
  %12377 = vmatprep.subr.bf16.mxu0 0
  %12378 = vmatpush1.bf16.msra.mxu0 %v9158
  %12379 = vmatprep.subr.bf16.mxu0 0
  %12380 = vmatpush1.bf16.msra.mxu0 %v9159
  %12381 = vmatprep.subr.bf16.mxu0 0
  %12382 = vmatpush1.bf16.msra.mxu0 %v9160
  %12383 = vmatprep.subr.bf16.mxu0 0
  %12384 = vmatpush1.bf16.msra.mxu0 %v9161
  %12385 = vmatprep.subr.bf16.mxu0 0
  %12386 = vmatpush1.bf16.msra.mxu0 %v9162
  %12387 = vmatprep.mubr.bf16.mxu0 %v3108
  %12388 = vmatmul.mubr.bf16.gmra.mrb[0].mxu0 %v3107
  %v12389 = vpop.f32.mrb[0].mxu0
  %v12390 = vadd.f32 %v12350, %v12389
  %v12391 = vpop.f32.mrb[0].mxu0
  %v12392 = vpop.f32.mrb[0].mxu0
  %v12393 = vpop.f32.mrb[0].mxu0
  %12394 = vdwg.mxu0
  %12395 = vmatprep.subr.bf16.mxu0 0
  %12396 = vmatpush1.bf16.msra.mxu0 %v9163
  %12397 = vmatprep.subr.bf16.mxu0 0
  %12398 = vmatpush1.bf16.msra.mxu0 %v9164
  %12399 = vmatprep.subr.bf16.mxu0 0
  %12400 = vmatpush1.bf16.msra.mxu0 %v9165
  %12401 = vmatprep.subr.bf16.mxu0 0
  %12402 = vmatpush1.bf16.msra.mxu0 %v9166
  %12403 = vmatprep.subr.bf16.mxu0 0
  %12404 = vmatpush1.bf16.msra.mxu0 %v9167
  %12405 = vmatprep.subr.bf16.mxu0 0
  %12406 = vmatpush1.bf16.msra.mxu0 %v9168
  %12407 = vmatprep.subr.bf16.mxu0 0
  %12408 = vmatpush1.bf16.msra.mxu0 %v9169
  %12409 = vmatprep.subr.bf16.mxu0 0
  %12410 = vmatpush1.bf16.msra.mxu0 %v9170
  %12411 = vmatprep.subr.bf16.mxu0 0
  %12412 = vmatpush1.bf16.msra.mxu0 %v9171
  %12413 = vmatprep.subr.bf16.mxu0 0
  %12414 = vmatpush1.bf16.msra.mxu0 %v9172
  %12415 = vmatprep.subr.bf16.mxu0 0
  %12416 = vmatpush1.bf16.msra.mxu0 %v9173
  %12417 = vmatprep.subr.bf16.mxu0 0
  %12418 = vmatpush1.bf16.msra.mxu0 %v9174
  %12419 = vmatprep.subr.bf16.mxu0 0
  %12420 = vmatpush1.bf16.msra.mxu0 %v9175
  %12421 = vmatprep.subr.bf16.mxu0 0
  %12422 = vmatpush1.bf16.msra.mxu0 %v9176
  %12423 = vmatprep.subr.bf16.mxu0 0
  %12424 = vmatpush1.bf16.msra.mxu0 %v9177
  %12425 = vmatprep.subr.bf16.mxu0 0
  %12426 = vmatpush1.bf16.msra.mxu0 %v9178
  %12427 = vmatprep.mubr.bf16.mxu0 %v3110
  %12428 = vmatmul.mubr.bf16.gmra.mrb[0].mxu0 %v3109
  %v12429 = vpop.f32.mrb[0].mxu0
  %v12430 = vadd.f32 %v12390, %v12429
  %v12431 = vpop.f32.mrb[0].mxu0
  %v12432 = vpop.f32.mrb[0].mxu0
  %v12433 = vpop.f32.mrb[0].mxu0
  %12434 = vdwg.mxu0
  %12435 = vmatprep.subr.bf16.mxu0 0
  %12436 = vmatpush1.bf16.msra.mxu0 %v9179
  %12437 = vmatprep.subr.bf16.mxu0 0
  %12438 = vmatpush1.bf16.msra.mxu0 %v9180
  %12439 = vmatprep.subr.bf16.mxu0 0
  %12440 = vmatpush1.bf16.msra.mxu0 %v9181
  %12441 = vmatprep.subr.bf16.mxu0 0
  %12442 = vmatpush1.bf16.msra.mxu0 %v9182
  %12443 = vmatprep.subr.bf16.mxu0 0
  %12444 = vmatpush1.bf16.msra.mxu0 %v9183
  %12445 = vmatprep.subr.bf16.mxu0 0
  %12446 = vmatpush1.bf16.msra.mxu0 %v9184
  %12447 = vmatprep.subr.bf16.mxu0 0
  %12448 = vmatpush1.bf16.msra.mxu0 %v9185
  %12449 = vmatprep.subr.bf16.mxu0 0
  %12450 = vmatpush1.bf16.msra.mxu0 %v9186
  %12451 = vmatprep.subr.bf16.mxu0 0
  %12452 = vmatpush1.bf16.msra.mxu0 %v9187
  %12453 = vmatprep.subr.bf16.mxu0 0
  %12454 = vmatpush1.bf16.msra.mxu0 %v9188
  %12455 = vmatprep.subr.bf16.mxu0 0
  %12456 = vmatpush1.bf16.msra.mxu0 %v9189
  %12457 = vmatprep.subr.bf16.mxu0 0
  %12458 = vmatpush1.bf16.msra.mxu0 %v9190
  %12459 = vmatprep.subr.bf16.mxu0 0
  %12460 = vmatpush1.bf16.msra.mxu0 %v9191
  %12461 = vmatprep.subr.bf16.mxu0 0
  %12462 = vmatpush1.bf16.msra.mxu0 %v9192
  %12463 = vmatprep.subr.bf16.mxu0 0
  %12464 = vmatpush1.bf16.msra.mxu0 %v9193
  %12465 = vmatprep.subr.bf16.mxu0 0
  %12466 = vmatpush1.bf16.msra.mxu0 %v9194
  %12467 = vmatprep.mubr.bf16.mxu0 %v3112
  %12468 = vmatmul.mubr.bf16.gmra.mrb[0].mxu0 %v3111
  %v12469 = vpop.f32.mrb[0].mxu0
  %v12470 = vadd.f32 %v12430, %v12469
  %v12471 = vpop.f32.mrb[0].mxu0
  %v12472 = vpop.f32.mrb[0].mxu0
  %v12473 = vpop.f32.mrb[0].mxu0
  %12474 = vdwg.mxu0
  %12475 = vmatprep.subr.bf16.mxu0 0
  %12476 = vmatpush1.bf16.msra.mxu0 %v9195
  %12477 = vmatprep.subr.bf16.mxu0 0
  %12478 = vmatpush1.bf16.msra.mxu0 %v9196
  %12479 = vmatprep.subr.bf16.mxu0 0
  %12480 = vmatpush1.bf16.msra.mxu0 %v9197
  %12481 = vmatprep.subr.bf16.mxu0 0
  %12482 = vmatpush1.bf16.msra.mxu0 %v9198
  %12483 = vmatprep.subr.bf16.mxu0 0
  %12484 = vmatpush1.bf16.msra.mxu0 %v9199
  %12485 = vmatprep.subr.bf16.mxu0 0
  %12486 = vmatpush1.bf16.msra.mxu0 %v9200
  %12487 = vmatprep.subr.bf16.mxu0 0
  %12488 = vmatpush1.bf16.msra.mxu0 %v9201
  %12489 = vmatprep.subr.bf16.mxu0 0
  %12490 = vmatpush1.bf16.msra.mxu0 %v9202
  %12491 = vmatprep.subr.bf16.mxu0 0
  %12492 = vmatpush1.bf16.msra.mxu0 %v9203
  %12493 = vmatprep.subr.bf16.mxu0 0
  %12494 = vmatpush1.bf16.msra.mxu0 %v9204
  %12495 = vmatprep.subr.bf16.mxu0 0
  %12496 = vmatpush1.bf16.msra.mxu0 %v9205
  %12497 = vmatprep.subr.bf16.mxu0 0
  %12498 = vmatpush1.bf16.msra.mxu0 %v9206
  %12499 = vmatprep.subr.bf16.mxu0 0
  %12500 = vmatpush1.bf16.msra.mxu0 %v9207
  %12501 = vmatprep.subr.bf16.mxu0 0
  %12502 = vmatpush1.bf16.msra.mxu0 %v9208
  %12503 = vmatprep.subr.bf16.mxu0 0
  %12504 = vmatpush1.bf16.msra.mxu0 %v9209
  %12505 = vmatprep.subr.bf16.mxu0 0
  %12506 = vmatpush1.bf16.msra.mxu0 %v9210
  %12507 = vmatprep.mubr.bf16.mxu0 %v3114
  %12508 = vmatmul.mubr.bf16.gmra.mrb[0].mxu0 %v3113
  %v12509 = vpop.f32.mrb[0].mxu0
  %v12510 = vadd.f32 %v12470, %v12509
  %v12511 = vpop.f32.mrb[0].mxu0
  %v12512 = vpop.f32.mrb[0].mxu0
  %v12513 = vpop.f32.mrb[0].mxu0
  %12514 = vdwg.mxu0
  %12515 = vmatprep.subr.bf16.mxu0 0
  %12516 = vmatpush1.bf16.msra.mxu0 %v9211
  %12517 = vmatprep.subr.bf16.mxu0 0
  %12518 = vmatpush1.bf16.msra.mxu0 %v9212
  %12519 = vmatprep.subr.bf16.mxu0 0
  %12520 = vmatpush1.bf16.msra.mxu0 %v9213
  %12521 = vmatprep.subr.bf16.mxu0 0
  %12522 = vmatpush1.bf16.msra.mxu0 %v9214
  %12523 = vmatprep.subr.bf16.mxu0 0
  %12524 = vmatpush1.bf16.msra.mxu0 %v9215
  %12525 = vmatprep.subr.bf16.mxu0 0
  %12526 = vmatpush1.bf16.msra.mxu0 %v9216
  %12527 = vmatprep.subr.bf16.mxu0 0
  %12528 = vmatpush1.bf16.msra.mxu0 %v9217
  %12529 = vmatprep.subr.bf16.mxu0 0
  %12530 = vmatpush1.bf16.msra.mxu0 %v9218
  %12531 = vmatprep.subr.bf16.mxu0 0
  %12532 = vmatpush1.bf16.msra.mxu0 %v9219
  %12533 = vmatprep.subr.bf16.mxu0 0
  %12534 = vmatpush1.bf16.msra.mxu0 %v9220
  %12535 = vmatprep.subr.bf16.mxu0 0
  %12536 = vmatpush1.bf16.msra.mxu0 %v9221
  %12537 = vmatprep.subr.bf16.mxu0 0
  %12538 = vmatpush1.bf16.msra.mxu0 %v9222
  %12539 = vmatprep.subr.bf16.mxu0 0
  %12540 = vmatpush1.bf16.msra.mxu0 %v9223
  %12541 = vmatprep.subr.bf16.mxu0 0
  %12542 = vmatpush1.bf16.msra.mxu0 %v9224
  %12543 = vmatprep.subr.bf16.mxu0 0
  %12544 = vmatpush1.bf16.msra.mxu0 %v9225
  %12545 = vmatprep.subr.bf16.mxu0 0
  %12546 = vmatpush1.bf16.msra.mxu0 %v9226
  %12547 = vmatprep.mubr.bf16.mxu0 %v3116
  %12548 = vmatmul.mubr.bf16.gmra.mrb[0].mxu0 %v3115
  %v12549 = vpop.f32.mrb[0].mxu0
  %v12550 = vadd.f32 %v12510, %v12549
  %v12551 = vpop.f32.mrb[0].mxu0
  %v12552 = vpop.f32.mrb[0].mxu0
  %v12553 = vpop.f32.mrb[0].mxu0
  %12554 = vdwg.mxu0
  %12555 = vmatprep.subr.bf16.mxu0 0
  %12556 = vmatpush1.bf16.msra.mxu0 %v9227
  %12557 = vmatprep.subr.bf16.mxu0 0
  %12558 = vmatpush1.bf16.msra.mxu0 %v9228
  %12559 = vmatprep.subr.bf16.mxu0 0
  %12560 = vmatpush1.bf16.msra.mxu0 %v9229
  %12561 = vmatprep.subr.bf16.mxu0 0
  %12562 = vmatpush1.bf16.msra.mxu0 %v9230
  %12563 = vmatprep.subr.bf16.mxu0 0
  %12564 = vmatpush1.bf16.msra.mxu0 %v9231
  %12565 = vmatprep.subr.bf16.mxu0 0
  %12566 = vmatpush1.bf16.msra.mxu0 %v9232
  %12567 = vmatprep.subr.bf16.mxu0 0
  %12568 = vmatpush1.bf16.msra.mxu0 %v9233
  %12569 = vmatprep.subr.bf16.mxu0 0
  %12570 = vmatpush1.bf16.msra.mxu0 %v9234
  %12571 = vmatprep.subr.bf16.mxu0 0
  %12572 = vmatpush1.bf16.msra.mxu0 %v9235
  %12573 = vmatprep.subr.bf16.mxu0 0
  %12574 = vmatpush1.bf16.msra.mxu0 %v9236
  %12575 = vmatprep.subr.bf16.mxu0 0
  %12576 = vmatpush1.bf16.msra.mxu0 %v9237
  %12577 = vmatprep.subr.bf16.mxu0 0
  %12578 = vmatpush1.bf16.msra.mxu0 %v9238
  %12579 = vmatprep.subr.bf16.mxu0 0
  %12580 = vmatpush1.bf16.msra.mxu0 %v9239
  %12581 = vmatprep.subr.bf16.mxu0 0
  %12582 = vmatpush1.bf16.msra.mxu0 %v9240
  %12583 = vmatprep.subr.bf16.mxu0 0
  %12584 = vmatpush1.bf16.msra.mxu0 %v9241
  %12585 = vmatprep.subr.bf16.mxu0 0
  %12586 = vmatpush1.bf16.msra.mxu0 %v9242
  %12587 = vmatprep.mubr.bf16.mxu0 %v3118
  %12588 = vmatmul.mubr.bf16.gmra.mrb[0].mxu0 %v3117
  %v12589 = vpop.f32.mrb[0].mxu0
  %v12590 = vadd.f32 %v12550, %v12589
  %v12591 = vpop.f32.mrb[0].mxu0
  %v12592 = vpop.f32.mrb[0].mxu0
  %v12593 = vpop.f32.mrb[0].mxu0
  %12594 = vdwg.mxu0
  %12595 = vmatprep.subr.bf16.mxu0 0
  %12596 = vmatpush1.bf16.msra.mxu0 %v9243
  %12597 = vmatprep.subr.bf16.mxu0 0
  %12598 = vmatpush1.bf16.msra.mxu0 %v9244
  %12599 = vmatprep.subr.bf16.mxu0 0
  %12600 = vmatpush1.bf16.msra.mxu0 %v9245
  %12601 = vmatprep.subr.bf16.mxu0 0
  %12602 = vmatpush1.bf16.msra.mxu0 %v9246
  %12603 = vmatprep.subr.bf16.mxu0 0
  %12604 = vmatpush1.bf16.msra.mxu0 %v9247
  %12605 = vmatprep.subr.bf16.mxu0 0
  %12606 = vmatpush1.bf16.msra.mxu0 %v9248
  %12607 = vmatprep.subr.bf16.mxu0 0
  %12608 = vmatpush1.bf16.msra.mxu0 %v9249
  %12609 = vmatprep.subr.bf16.mxu0 0
  %12610 = vmatpush1.bf16.msra.mxu0 %v9250
  %12611 = vmatprep.subr.bf16.mxu0 0
  %12612 = vmatpush1.bf16.msra.mxu0 %v9251
  %12613 = vmatprep.subr.bf16.mxu0 0
  %12614 = vmatpush1.bf16.msra.mxu0 %v9252
  %12615 = vmatprep.subr.bf16.mxu0 0
  %12616 = vmatpush1.bf16.msra.mxu0 %v9253
  %12617 = vmatprep.subr.bf16.mxu0 0
  %12618 = vmatpush1.bf16.msra.mxu0 %v9254
  %12619 = vmatprep.subr.bf16.mxu0 0
  %12620 = vmatpush1.bf16.msra.mxu0 %v9255
  %12621 = vmatprep.subr.bf16.mxu0 0
  %12622 = vmatpush1.bf16.msra.mxu0 %v9256
  %12623 = vmatprep.subr.bf16.mxu0 0
  %12624 = vmatpush1.bf16.msra.mxu0 %v9257
  %12625 = vmatprep.subr.bf16.mxu0 0
  %12626 = vmatpush1.bf16.msra.mxu0 %v9258
  %12627 = vmatprep.mubr.bf16.mxu0 %v3120
  %12628 = vmatmul.mubr.bf16.gmra.mrb[0].mxu0 %v3119
  %v12629 = vpop.f32.mrb[0].mxu0
  %v12630 = vadd.f32 %v12590, %v12629
  %v12631 = vpop.f32.mrb[0].mxu0
  %v12632 = vpop.f32.mrb[0].mxu0
  %v12633 = vpop.f32.mrb[0].mxu0
  %12634 = vdwg.mxu0
  %12635 = vmatprep.subr.bf16.mxu0 0
  %12636 = vmatpush1.bf16.msra.mxu0 %v9259
  %12637 = vmatprep.subr.bf16.mxu0 0
  %12638 = vmatpush1.bf16.msra.mxu0 %v9260
  %12639 = vmatprep.subr.bf16.mxu0 0
  %12640 = vmatpush1.bf16.msra.mxu0 %v9261
  %12641 = vmatprep.subr.bf16.mxu0 0
  %12642 = vmatpush1.bf16.msra.mxu0 %v9262
  %12643 = vmatprep.subr.bf16.mxu0 0
  %12644 = vmatpush1.bf16.msra.mxu0 %v9263
  %12645 = vmatprep.subr.bf16.mxu0 0
  %12646 = vmatpush1.bf16.msra.mxu0 %v9264
  %12647 = vmatprep.subr.bf16.mxu0 0
  %12648 = vmatpush1.bf16.msra.mxu0 %v9265
  %12649 = vmatprep.subr.bf16.mxu0 0
  %12650 = vmatpush1.bf16.msra.mxu0 %v9266
  %12651 = vmatprep.subr.bf16.mxu0 0
  %12652 = vmatpush1.bf16.msra.mxu0 %v9267
  %12653 = vmatprep.subr.bf16.mxu0 0
  %12654 = vmatpush1.bf16.msra.mxu0 %v9268
  %12655 = vmatprep.subr.bf16.mxu0 0
  %12656 = vmatpush1.bf16.msra.mxu0 %v9269
  %12657 = vmatprep.subr.bf16.mxu0 0
  %12658 = vmatpush1.bf16.msra.mxu0 %v9270
  %12659 = vmatprep.subr.bf16.mxu0 0
  %12660 = vmatpush1.bf16.msra.mxu0 %v9271
  %12661 = vmatprep.subr.bf16.mxu0 0
  %12662 = vmatpush1.bf16.msra.mxu0 %v9272
  %12663 = vmatprep.subr.bf16.mxu0 0
  %12664 = vmatpush1.bf16.msra.mxu0 %v9273
  %12665 = vmatprep.subr.bf16.mxu0 0
  %12666 = vmatpush1.bf16.msra.mxu0 %v9274
  %12667 = vmatprep.mubr.bf16.mxu0 %v3122
  %12668 = vmatmul.mubr.bf16.gmra.mrb[0].mxu0 %v3121
  %v12669 = vpop.f32.mrb[0].mxu0
  %v12670 = vadd.f32 %v12630, %v12669
  %v12671 = vpop.f32.mrb[0].mxu0
  %v12672 = vpop.f32.mrb[0].mxu0
  %v12673 = vpop.f32.mrb[0].mxu0
  %12674 = vdwg.mxu0
  %12675 = vmatprep.subr.bf16.mxu0 0
  %12676 = vmatpush1.bf16.msra.mxu0 %v9275
  %12677 = vmatprep.subr.bf16.mxu0 0
  %12678 = vmatpush1.bf16.msra.mxu0 %v9276
  %12679 = vmatprep.subr.bf16.mxu0 0
  %12680 = vmatpush1.bf16.msra.mxu0 %v9277
  %12681 = vmatprep.subr.bf16.mxu0 0
  %12682 = vmatpush1.bf16.msra.mxu0 %v9278
  %12683 = vmatprep.subr.bf16.mxu0 0
  %12684 = vmatpush1.bf16.msra.mxu0 %v9279
  %12685 = vmatprep.subr.bf16.mxu0 0
  %12686 = vmatpush1.bf16.msra.mxu0 %v9280
  %12687 = vmatprep.subr.bf16.mxu0 0
  %12688 = vmatpush1.bf16.msra.mxu0 %v9281
  %12689 = vmatprep.subr.bf16.mxu0 0
  %12690 = vmatpush1.bf16.msra.mxu0 %v9282
  %12691 = vmatprep.subr.bf16.mxu0 0
  %12692 = vmatpush1.bf16.msra.mxu0 %v9283
  %12693 = vmatprep.subr.bf16.mxu0 0
  %12694 = vmatpush1.bf16.msra.mxu0 %v9284
  %12695 = vmatprep.subr.bf16.mxu0 0
  %12696 = vmatpush1.bf16.msra.mxu0 %v9285
  %12697 = vmatprep.subr.bf16.mxu0 0
  %12698 = vmatpush1.bf16.msra.mxu0 %v9286
  %12699 = vmatprep.subr.bf16.mxu0 0
  %12700 = vmatpush1.bf16.msra.mxu0 %v9287
  %12701 = vmatprep.subr.bf16.mxu0 0
  %12702 = vmatpush1.bf16.msra.mxu0 %v9288
  %12703 = vmatprep.subr.bf16.mxu0 0
  %12704 = vmatpush1.bf16.msra.mxu0 %v9289
  %12705 = vmatprep.subr.bf16.mxu0 0
  %12706 = vmatpush1.bf16.msra.mxu0 %v9290
  %12707 = vmatprep.mubr.bf16.mxu0 %v3124
  %12708 = vmatmul.mubr.bf16.gmra.mrb[0].mxu0 %v3123
  %v12709 = vpop.f32.mrb[0].mxu0
  %v12710 = vadd.f32 %v12670, %v12709
  %v12711 = vpop.f32.mrb[0].mxu0
  %v12712 = vpop.f32.mrb[0].mxu0
  %v12713 = vpop.f32.mrb[0].mxu0
  %12714 = vdwg.mxu0
  %12715 = vmatprep.subr.bf16.mxu0 0
  %12716 = vmatpush1.bf16.msra.mxu0 %v9291
  %12717 = vmatprep.subr.bf16.mxu0 0
  %12718 = vmatpush1.bf16.msra.mxu0 %v9292
  %12719 = vmatprep.subr.bf16.mxu0 0
  %12720 = vmatpush1.bf16.msra.mxu0 %v9293
  %12721 = vmatprep.subr.bf16.mxu0 0
  %12722 = vmatpush1.bf16.msra.mxu0 %v9294
  %12723 = vmatprep.subr.bf16.mxu0 0
  %12724 = vmatpush1.bf16.msra.mxu0 %v9295
  %12725 = vmatprep.subr.bf16.mxu0 0
  %12726 = vmatpush1.bf16.msra.mxu0 %v9296
  %12727 = vmatprep.subr.bf16.mxu0 0
  %12728 = vmatpush1.bf16.msra.mxu0 %v9297
  %12729 = vmatprep.subr.bf16.mxu0 0
  %12730 = vmatpush1.bf16.msra.mxu0 %v9298
  %12731 = vmatprep.subr.bf16.mxu0 0
  %12732 = vmatpush1.bf16.msra.mxu0 %v9299
  %12733 = vmatprep.subr.bf16.mxu0 0
  %12734 = vmatpush1.bf16.msra.mxu0 %v9300
  %12735 = vmatprep.subr.bf16.mxu0 0
  %12736 = vmatpush1.bf16.msra.mxu0 %v9301
  %12737 = vmatprep.subr.bf16.mxu0 0
  %12738 = vmatpush1.bf16.msra.mxu0 %v9302
  %12739 = vmatprep.subr.bf16.mxu0 0
  %12740 = vmatpush1.bf16.msra.mxu0 %v9303
  %12741 = vmatprep.subr.bf16.mxu0 0
  %12742 = vmatpush1.bf16.msra.mxu0 %v9304
  %12743 = vmatprep.subr.bf16.mxu0 0
  %12744 = vmatpush1.bf16.msra.mxu0 %v9305
  %12745 = vmatprep.subr.bf16.mxu0 0
  %12746 = vmatpush1.bf16.msra.mxu0 %v9306
  %12747 = vmatprep.mubr.bf16.mxu0 %v3126
  %12748 = vmatmul.mubr.bf16.gmra.mrb[0].mxu0 %v3125
  %v12749 = vpop.f32.mrb[0].mxu0
  %v12750 = vadd.f32 %v12710, %v12749
  %v12751 = vpop.f32.mrb[0].mxu0
  %v12752 = vpop.f32.mrb[0].mxu0
  %v12753 = vpop.f32.mrb[0].mxu0
  %12754 = vdwg.mxu0
  %12755 = vmatprep.subr.bf16.mxu0 0
  %12756 = vmatpush1.bf16.msra.mxu0 %v9307
  %12757 = vmatprep.subr.bf16.mxu0 0
  %12758 = vmatpush1.bf16.msra.mxu0 %v9308
  %12759 = vmatprep.subr.bf16.mxu0 0
  %12760 = vmatpush1.bf16.msra.mxu0 %v9309
  %12761 = vmatprep.subr.bf16.mxu0 0
  %12762 = vmatpush1.bf16.msra.mxu0 %v9310
  %12763 = vmatprep.subr.bf16.mxu0 0
  %12764 = vmatpush1.bf16.msra.mxu0 %v9311
  %12765 = vmatprep.subr.bf16.mxu0 0
  %12766 = vmatpush1.bf16.msra.mxu0 %v9312
  %12767 = vmatprep.subr.bf16.mxu0 0
  %12768 = vmatpush1.bf16.msra.mxu0 %v9313
  %12769 = vmatprep.subr.bf16.mxu0 0
  %12770 = vmatpush1.bf16.msra.mxu0 %v9314
  %12771 = vmatprep.subr.bf16.mxu0 0
  %12772 = vmatpush1.bf16.msra.mxu0 %v9315
  %12773 = vmatprep.subr.bf16.mxu0 0
  %12774 = vmatpush1.bf16.msra.mxu0 %v9316
  %12775 = vmatprep.subr.bf16.mxu0 0
  %12776 = vmatpush1.bf16.msra.mxu0 %v9317
  %12777 = vmatprep.subr.bf16.mxu0 0
  %12778 = vmatpush1.bf16.msra.mxu0 %v9318
  %12779 = vmatprep.subr.bf16.mxu0 0
  %12780 = vmatpush1.bf16.msra.mxu0 %v9319
  %12781 = vmatprep.subr.bf16.mxu0 0
  %12782 = vmatpush1.bf16.msra.mxu0 %v9320
  %12783 = vmatprep.subr.bf16.mxu0 0
  %12784 = vmatpush1.bf16.msra.mxu0 %v9321
  %12785 = vmatprep.subr.bf16.mxu0 0
  %12786 = vmatpush1.bf16.msra.mxu0 %v9322
  %12787 = vmatprep.mubr.bf16.mxu0 %v3128
  %12788 = vmatmul.mubr.bf16.gmra.mrb[0].mxu0 %v3127
  %v12789 = vpop.f32.mrb[0].mxu0
  %v12790 = vadd.f32 %v12750, %v12789
  %v12791 = vpop.f32.mrb[0].mxu0
  %v12792 = vpop.f32.mrb[0].mxu0
  %v12793 = vpop.f32.mrb[0].mxu0
  %12794 = vdwg.mxu0
  %12795 = vmatprep.subr.bf16.mxu0 0
  %12796 = vmatpush1.bf16.msra.mxu0 %v9323
  %12797 = vmatprep.subr.bf16.mxu0 0
  %12798 = vmatpush1.bf16.msra.mxu0 %v9324
  %12799 = vmatprep.subr.bf16.mxu0 0
  %12800 = vmatpush1.bf16.msra.mxu0 %v9325
  %12801 = vmatprep.subr.bf16.mxu0 0
  %12802 = vmatpush1.bf16.msra.mxu0 %v9326
  %12803 = vmatprep.subr.bf16.mxu0 0
  %12804 = vmatpush1.bf16.msra.mxu0 %v9327
  %12805 = vmatprep.subr.bf16.mxu0 0
  %12806 = vmatpush1.bf16.msra.mxu0 %v9328
  %12807 = vmatprep.subr.bf16.mxu0 0
  %12808 = vmatpush1.bf16.msra.mxu0 %v9329
  %12809 = vmatprep.subr.bf16.mxu0 0
  %12810 = vmatpush1.bf16.msra.mxu0 %v9330
  %12811 = vmatprep.subr.bf16.mxu0 0
  %12812 = vmatpush1.bf16.msra.mxu0 %v9331
  %12813 = vmatprep.subr.bf16.mxu0 0
  %12814 = vmatpush1.bf16.msra.mxu0 %v9332
  %12815 = vmatprep.subr.bf16.mxu0 0
  %12816 = vmatpush1.bf16.msra.mxu0 %v9333
  %12817 = vmatprep.subr.bf16.mxu0 0
  %12818 = vmatpush1.bf16.msra.mxu0 %v9334
  %12819 = vmatprep.subr.bf16.mxu0 0
  %12820 = vmatpush1.bf16.msra.mxu0 %v9335
  %12821 = vmatprep.subr.bf16.mxu0 0
  %12822 = vmatpush1.bf16.msra.mxu0 %v9336
  %12823 = vmatprep.subr.bf16.mxu0 0
  %12824 = vmatpush1.bf16.msra.mxu0 %v9337
  %12825 = vmatprep.subr.bf16.mxu0 0
  %12826 = vmatpush1.bf16.msra.mxu0 %v9338
  %12827 = vmatprep.mubr.bf16.mxu0 %v3130
  %12828 = vmatmul.mubr.bf16.gmra.mrb[0].mxu0 %v3129
  %v12829 = vpop.f32.mrb[0].mxu0
  %v12830 = vadd.f32 %v12790, %v12829
  %v12831 = vpop.f32.mrb[0].mxu0
  %v12832 = vpop.f32.mrb[0].mxu0
  %v12833 = vpop.f32.mrb[0].mxu0
  %12834 = vdwg.mxu0
  %12835 = vmatprep.subr.bf16.mxu0 0
  %12836 = vmatpush1.bf16.msra.mxu0 %v9339
  %12837 = vmatprep.subr.bf16.mxu0 0
  %12838 = vmatpush1.bf16.msra.mxu0 %v9340
  %12839 = vmatprep.subr.bf16.mxu0 0
  %12840 = vmatpush1.bf16.msra.mxu0 %v9341
  %12841 = vmatprep.subr.bf16.mxu0 0
  %12842 = vmatpush1.bf16.msra.mxu0 %v9342
  %12843 = vmatprep.subr.bf16.mxu0 0
  %12844 = vmatpush1.bf16.msra.mxu0 %v9343
  %12845 = vmatprep.subr.bf16.mxu0 0
  %12846 = vmatpush1.bf16.msra.mxu0 %v9344
  %12847 = vmatprep.subr.bf16.mxu0 0
  %12848 = vmatpush1.bf16.msra.mxu0 %v9345
  %12849 = vmatprep.subr.bf16.mxu0 0
  %12850 = vmatpush1.bf16.msra.mxu0 %v9346
  %12851 = vmatprep.subr.bf16.mxu0 0
  %12852 = vmatpush1.bf16.msra.mxu0 %v9347
  %12853 = vmatprep.subr.bf16.mxu0 0
  %12854 = vmatpush1.bf16.msra.mxu0 %v9348
  %12855 = vmatprep.subr.bf16.mxu0 0
  %12856 = vmatpush1.bf16.msra.mxu0 %v9349
  %12857 = vmatprep.subr.bf16.mxu0 0
  %12858 = vmatpush1.bf16.msra.mxu0 %v9350
  %12859 = vmatprep.subr.bf16.mxu0 0
  %12860 = vmatpush1.bf16.msra.mxu0 %v9351
  %12861 = vmatprep.subr.bf16.mxu0 0
  %12862 = vmatpush1.bf16.msra.mxu0 %v9352
  %12863 = vmatprep.subr.bf16.mxu0 0
  %12864 = vmatpush1.bf16.msra.mxu0 %v9353
  %12865 = vmatprep.subr.bf16.mxu0 0
  %12866 = vmatpush1.bf16.msra.mxu0 %v9354
  %12867 = vmatprep.mubr.bf16.mxu0 %v3132
  %12868 = vmatmul.mubr.bf16.gmra.mrb[0].mxu0 %v3131
  %v12869 = vpop.f32.mrb[0].mxu0
  %v12870 = vadd.f32 %v12830, %v12869
  %v12871 = vpop.f32.mrb[0].mxu0
  %v12872 = vpop.f32.mrb[0].mxu0
  %v12873 = vpop.f32.mrb[0].mxu0
  %12874 = vdwg.mxu0
  %12875 = vmatprep.subr.bf16.mxu0 0
  %12876 = vmatpush1.bf16.msra.mxu0 %v9355
  %12877 = vmatprep.subr.bf16.mxu0 0
  %12878 = vmatpush1.bf16.msra.mxu0 %v9356
  %12879 = vmatprep.subr.bf16.mxu0 0
  %12880 = vmatpush1.bf16.msra.mxu0 %v9357
  %12881 = vmatprep.subr.bf16.mxu0 0
  %12882 = vmatpush1.bf16.msra.mxu0 %v9358
  %12883 = vmatprep.subr.bf16.mxu0 0
  %12884 = vmatpush1.bf16.msra.mxu0 %v9359
  %12885 = vmatprep.subr.bf16.mxu0 0
  %12886 = vmatpush1.bf16.msra.mxu0 %v9360
  %12887 = vmatprep.subr.bf16.mxu0 0
  %12888 = vmatpush1.bf16.msra.mxu0 %v9361
  %12889 = vmatprep.subr.bf16.mxu0 0
  %12890 = vmatpush1.bf16.msra.mxu0 %v9362
  %12891 = vmatprep.subr.bf16.mxu0 0
  %12892 = vmatpush1.bf16.msra.mxu0 %v9363
  %12893 = vmatprep.subr.bf16.mxu0 0
  %12894 = vmatpush1.bf16.msra.mxu0 %v9364
  %12895 = vmatprep.subr.bf16.mxu0 0
  %12896 = vmatpush1.bf16.msra.mxu0 %v9365
  %12897 = vmatprep.subr.bf16.mxu0 0
  %12898 = vmatpush1.bf16.msra.mxu0 %v9366
  %12899 = vmatprep.subr.bf16.mxu0 0
  %12900 = vmatpush1.bf16.msra.mxu0 %v9367
  %12901 = vmatprep.subr.bf16.mxu0 0
  %12902 = vmatpush1.bf16.msra.mxu0 %v9368
  %12903 = vmatprep.subr.bf16.mxu0 0
  %12904 = vmatpush1.bf16.msra.mxu0 %v9369
  %12905 = vmatprep.subr.bf16.mxu0 0
  %12906 = vmatpush1.bf16.msra.mxu0 %v9370
  %12907 = vmatprep.mubr.bf16.mxu0 %v3134
  %12908 = vmatmul.mubr.bf16.gmra.mrb[0].mxu0 %v3133
  %v12909 = vpop.f32.mrb[0].mxu0
  %v12910 = vadd.f32 %v12870, %v12909
  %v12911 = vpop.f32.mrb[0].mxu0
  %v12912 = vpop.f32.mrb[0].mxu0
  %v12913 = vpop.f32.mrb[0].mxu0
  %12914 = vdwg.mxu0
  %12915 = vmatprep.subr.bf16.mxu0 0
  %12916 = vmatpush1.bf16.msra.mxu0 %v9371
  %12917 = vmatprep.subr.bf16.mxu0 0
  %12918 = vmatpush1.bf16.msra.mxu0 %v9372
  %12919 = vmatprep.subr.bf16.mxu0 0
  %12920 = vmatpush1.bf16.msra.mxu0 %v9373
  %12921 = vmatprep.subr.bf16.mxu0 0
  %12922 = vmatpush1.bf16.msra.mxu0 %v9374
  %12923 = vmatprep.subr.bf16.mxu0 0
  %12924 = vmatpush1.bf16.msra.mxu0 %v9375
  %12925 = vmatprep.subr.bf16.mxu0 0
  %12926 = vmatpush1.bf16.msra.mxu0 %v9376
  %12927 = vmatprep.subr.bf16.mxu0 0
  %12928 = vmatpush1.bf16.msra.mxu0 %v9377
  %12929 = vmatprep.subr.bf16.mxu0 0
  %12930 = vmatpush1.bf16.msra.mxu0 %v9378
  %12931 = vmatprep.subr.bf16.mxu0 0
  %12932 = vmatpush1.bf16.msra.mxu0 %v9379
  %12933 = vmatprep.subr.bf16.mxu0 0
  %12934 = vmatpush1.bf16.msra.mxu0 %v9380
  %12935 = vmatprep.subr.bf16.mxu0 0
  %12936 = vmatpush1.bf16.msra.mxu0 %v9381
  %12937 = vmatprep.subr.bf16.mxu0 0
  %12938 = vmatpush1.bf16.msra.mxu0 %v9382
  %12939 = vmatprep.subr.bf16.mxu0 0
  %12940 = vmatpush1.bf16.msra.mxu0 %v9383
  %12941 = vmatprep.subr.bf16.mxu0 0
  %12942 = vmatpush1.bf16.msra.mxu0 %v9384
  %12943 = vmatprep.subr.bf16.mxu0 0
  %12944 = vmatpush1.bf16.msra.mxu0 %v9385
  %12945 = vmatprep.subr.bf16.mxu0 0
  %12946 = vmatpush1.bf16.msra.mxu0 %v9386
  %12947 = vmatprep.mubr.bf16.mxu0 %v3136
  %12948 = vmatmul.mubr.bf16.gmra.mrb[0].mxu0 %v3135
  %v12949 = vpop.f32.mrb[0].mxu0
  %v12950 = vadd.f32 %v12910, %v12949
  %v12951 = vpop.f32.mrb[0].mxu0
  %v12952 = vpop.f32.mrb[0].mxu0
  %v12953 = vpop.f32.mrb[0].mxu0
  %12954 = vdwg.mxu0
  %12955 = vmatprep.subr.bf16.mxu0 0
  %12956 = vmatpush1.bf16.msra.mxu0 %v9387
  %12957 = vmatprep.subr.bf16.mxu0 0
  %12958 = vmatpush1.bf16.msra.mxu0 %v9388
  %12959 = vmatprep.subr.bf16.mxu0 0
  %12960 = vmatpush1.bf16.msra.mxu0 %v9389
  %12961 = vmatprep.subr.bf16.mxu0 0
  %12962 = vmatpush1.bf16.msra.mxu0 %v9390
  %12963 = vmatprep.subr.bf16.mxu0 0
  %12964 = vmatpush1.bf16.msra.mxu0 %v9391
  %12965 = vmatprep.subr.bf16.mxu0 0
  %12966 = vmatpush1.bf16.msra.mxu0 %v9392
  %12967 = vmatprep.subr.bf16.mxu0 0
  %12968 = vmatpush1.bf16.msra.mxu0 %v9393
  %12969 = vmatprep.subr.bf16.mxu0 0
  %12970 = vmatpush1.bf16.msra.mxu0 %v9394
  %12971 = vmatprep.subr.bf16.mxu0 0
  %12972 = vmatpush1.bf16.msra.mxu0 %v9395
  %12973 = vmatprep.subr.bf16.mxu0 0
  %12974 = vmatpush1.bf16.msra.mxu0 %v9396
  %12975 = vmatprep.subr.bf16.mxu0 0
  %12976 = vmatpush1.bf16.msra.mxu0 %v9397
  %12977 = vmatprep.subr.bf16.mxu0 0
  %12978 = vmatpush1.bf16.msra.mxu0 %v9398
  %12979 = vmatprep.subr.bf16.mxu0 0
  %12980 = vmatpush1.bf16.msra.mxu0 %v9399
  %12981 = vmatprep.subr.bf16.mxu0 0
  %12982 = vmatpush1.bf16.msra.mxu0 %v9400
  %12983 = vmatprep.subr.bf16.mxu0 0
  %12984 = vmatpush1.bf16.msra.mxu0 %v9401
  %12985 = vmatprep.subr.bf16.mxu0 0
  %12986 = vmatpush1.bf16.msra.mxu0 %v9402
  %12987 = vmatprep.mubr.bf16.mxu0 %v3138
  %12988 = vmatmul.mubr.bf16.gmra.mrb[0].mxu0 %v3137
  %v12989 = vpop.f32.mrb[0].mxu0
  %v12990 = vadd.f32 %v12950, %v12989
  %v12991 = vpop.f32.mrb[0].mxu0
  %v12992 = vpop.f32.mrb[0].mxu0
  %v12993 = vpop.f32.mrb[0].mxu0
  %12994 = vdwg.mxu0
  %12995 = vmatprep.subr.bf16.mxu0 0
  %12996 = vmatpush1.bf16.msra.mxu0 %v9403
  %12997 = vmatprep.subr.bf16.mxu0 0
  %12998 = vmatpush1.bf16.msra.mxu0 %v9404
  %12999 = vmatprep.subr.bf16.mxu0 0
  %13000 = vmatpush1.bf16.msra.mxu0 %v9405
  %13001 = vmatprep.subr.bf16.mxu0 0
  %13002 = vmatpush1.bf16.msra.mxu0 %v9406
  %13003 = vmatprep.subr.bf16.mxu0 0
  %13004 = vmatpush1.bf16.msra.mxu0 %v9407
  %13005 = vmatprep.subr.bf16.mxu0 0
  %13006 = vmatpush1.bf16.msra.mxu0 %v9408
  %13007 = vmatprep.subr.bf16.mxu0 0
  %13008 = vmatpush1.bf16.msra.mxu0 %v9409
  %13009 = vmatprep.subr.bf16.mxu0 0
  %13010 = vmatpush1.bf16.msra.mxu0 %v9410
  %13011 = vmatprep.subr.bf16.mxu0 0
  %13012 = vmatpush1.bf16.msra.mxu0 %v9411
  %13013 = vmatprep.subr.bf16.mxu0 0
  %13014 = vmatpush1.bf16.msra.mxu0 %v9412
  %13015 = vmatprep.subr.bf16.mxu0 0
  %13016 = vmatpush1.bf16.msra.mxu0 %v9413
  %13017 = vmatprep.subr.bf16.mxu0 0
  %13018 = vmatpush1.bf16.msra.mxu0 %v9414
  %13019 = vmatprep.subr.bf16.mxu0 0
  %13020 = vmatpush1.bf16.msra.mxu0 %v9415
  %13021 = vmatprep.subr.bf16.mxu0 0
  %13022 = vmatpush1.bf16.msra.mxu0 %v9416
  %13023 = vmatprep.subr.bf16.mxu0 0
  %13024 = vmatpush1.bf16.msra.mxu0 %v9417
  %13025 = vmatprep.subr.bf16.mxu0 0
  %13026 = vmatpush1.bf16.msra.mxu0 %v9418
  %13027 = vmatprep.mubr.bf16.mxu0 %v3140
  %13028 = vmatmul.mubr.bf16.gmra.mrb[0].mxu0 %v3139
  %v13029 = vpop.f32.mrb[0].mxu0
  %v13030 = vadd.f32 %v12990, %v13029
  %v13031 = vpop.f32.mrb[0].mxu0
  %v13032 = vpop.f32.mrb[0].mxu0
  %v13033 = vpop.f32.mrb[0].mxu0
  %13034 = vdwg.mxu0
  %13035 = vmatprep.subr.bf16.mxu0 0
  %13036 = vmatpush1.bf16.msra.mxu0 %v9419
  %13037 = vmatprep.subr.bf16.mxu0 0
  %13038 = vmatpush1.bf16.msra.mxu0 %v9420
  %13039 = vmatprep.subr.bf16.mxu0 0
  %13040 = vmatpush1.bf16.msra.mxu0 %v9421
  %13041 = vmatprep.subr.bf16.mxu0 0
  %13042 = vmatpush1.bf16.msra.mxu0 %v9422
  %13043 = vmatprep.subr.bf16.mxu0 0
  %13044 = vmatpush1.bf16.msra.mxu0 %v9423
  %13045 = vmatprep.subr.bf16.mxu0 0
  %13046 = vmatpush1.bf16.msra.mxu0 %v9424
  %13047 = vmatprep.subr.bf16.mxu0 0
  %13048 = vmatpush1.bf16.msra.mxu0 %v9425
  %13049 = vmatprep.subr.bf16.mxu0 0
  %13050 = vmatpush1.bf16.msra.mxu0 %v9426
  %13051 = vmatprep.subr.bf16.mxu0 0
  %13052 = vmatpush1.bf16.msra.mxu0 %v9427
  %13053 = vmatprep.subr.bf16.mxu0 0
  %13054 = vmatpush1.bf16.msra.mxu0 %v9428
  %13055 = vmatprep.subr.bf16.mxu0 0
  %13056 = vmatpush1.bf16.msra.mxu0 %v9429
  %13057 = vmatprep.subr.bf16.mxu0 0
  %13058 = vmatpush1.bf16.msra.mxu0 %v9430
  %13059 = vmatprep.subr.bf16.mxu0 0
  %13060 = vmatpush1.bf16.msra.mxu0 %v9431
  %13061 = vmatprep.subr.bf16.mxu0 0
  %13062 = vmatpush1.bf16.msra.mxu0 %v9432
  %13063 = vmatprep.subr.bf16.mxu0 0
  %13064 = vmatpush1.bf16.msra.mxu0 %v9433
  %13065 = vmatprep.subr.bf16.mxu0 0
  %13066 = vmatpush1.bf16.msra.mxu0 %v9434
  %13067 = vmatprep.mubr.bf16.mxu0 %v3142
  %13068 = vmatmul.mubr.bf16.gmra.mrb[0].mxu0 %v3141
  %v13069 = vpop.f32.mrb[0].mxu0
  %v13070 = vadd.f32 %v13030, %v13069
  %v13071 = vpop.f32.mrb[0].mxu0
  %v13072 = vpop.f32.mrb[0].mxu0
  %v13073 = vpop.f32.mrb[0].mxu0
  %13074 = vdwg.mxu0
  %13075 = vmatprep.subr.bf16.mxu0 0
  %13076 = vmatpush1.bf16.msra.mxu0 %v9435
  %13077 = vmatprep.subr.bf16.mxu0 0
  %13078 = vmatpush1.bf16.msra.mxu0 %v9436
  %13079 = vmatprep.subr.bf16.mxu0 0
  %13080 = vmatpush1.bf16.msra.mxu0 %v9437
  %13081 = vmatprep.subr.bf16.mxu0 0
  %13082 = vmatpush1.bf16.msra.mxu0 %v9438
  %13083 = vmatprep.subr.bf16.mxu0 0
  %13084 = vmatpush1.bf16.msra.mxu0 %v9439
  %13085 = vmatprep.subr.bf16.mxu0 0
  %13086 = vmatpush1.bf16.msra.mxu0 %v9440
  %13087 = vmatprep.subr.bf16.mxu0 0
  %13088 = vmatpush1.bf16.msra.mxu0 %v9441
  %13089 = vmatprep.subr.bf16.mxu0 0
  %13090 = vmatpush1.bf16.msra.mxu0 %v9442
  %13091 = vmatprep.subr.bf16.mxu0 0
  %13092 = vmatpush1.bf16.msra.mxu0 %v9443
  %13093 = vmatprep.subr.bf16.mxu0 0
  %13094 = vmatpush1.bf16.msra.mxu0 %v9444
  %13095 = vmatprep.subr.bf16.mxu0 0
  %13096 = vmatpush1.bf16.msra.mxu0 %v9445
  %13097 = vmatprep.subr.bf16.mxu0 0
  %13098 = vmatpush1.bf16.msra.mxu0 %v9446
  %13099 = vmatprep.subr.bf16.mxu0 0
  %13100 = vmatpush1.bf16.msra.mxu0 %v9447
  %13101 = vmatprep.subr.bf16.mxu0 0
  %13102 = vmatpush1.bf16.msra.mxu0 %v9448
  %13103 = vmatprep.subr.bf16.mxu0 0
  %13104 = vmatpush1.bf16.msra.mxu0 %v9449
  %13105 = vmatprep.subr.bf16.mxu0 0
  %13106 = vmatpush1.bf16.msra.mxu0 %v9450
  %13107 = vmatprep.mubr.bf16.mxu0 %v3144
  %13108 = vmatmul.mubr.bf16.gmra.mrb[0].mxu0 %v3143
  %v13109 = vpop.f32.mrb[0].mxu0
  %v13110 = vadd.f32 %v13070, %v13109
  %v13111 = vpop.f32.mrb[0].mxu0
  %v13112 = vpop.f32.mrb[0].mxu0
  %v13113 = vpop.f32.mrb[0].mxu0
  %13114 = vdwg.mxu0
  %13115 = vmatprep.subr.bf16.mxu0 0
  %13116 = vmatpush1.bf16.msra.mxu0 %v9451
  %13117 = vmatprep.subr.bf16.mxu0 0
  %13118 = vmatpush1.bf16.msra.mxu0 %v9452
  %13119 = vmatprep.subr.bf16.mxu0 0
  %13120 = vmatpush1.bf16.msra.mxu0 %v9453
  %13121 = vmatprep.subr.bf16.mxu0 0
  %13122 = vmatpush1.bf16.msra.mxu0 %v9454
  %13123 = vmatprep.subr.bf16.mxu0 0
  %13124 = vmatpush1.bf16.msra.mxu0 %v9455
  %13125 = vmatprep.subr.bf16.mxu0 0
  %13126 = vmatpush1.bf16.msra.mxu0 %v9456
  %13127 = vmatprep.subr.bf16.mxu0 0
  %13128 = vmatpush1.bf16.msra.mxu0 %v9457
  %13129 = vmatprep.subr.bf16.mxu0 0
  %13130 = vmatpush1.bf16.msra.mxu0 %v9458
  %13131 = vmatprep.subr.bf16.mxu0 0
  %13132 = vmatpush1.bf16.msra.mxu0 %v9459
  %13133 = vmatprep.subr.bf16.mxu0 0
  %13134 = vmatpush1.bf16.msra.mxu0 %v9460
  %13135 = vmatprep.subr.bf16.mxu0 0
  %13136 = vmatpush1.bf16.msra.mxu0 %v9461
  %13137 = vmatprep.subr.bf16.mxu0 0
  %13138 = vmatpush1.bf16.msra.mxu0 %v9462
  %13139 = vmatprep.subr.bf16.mxu0 0
  %13140 = vmatpush1.bf16.msra.mxu0 %v9463
  %13141 = vmatprep.subr.bf16.mxu0 0
  %13142 = vmatpush1.bf16.msra.mxu0 %v9464
  %13143 = vmatprep.subr.bf16.mxu0 0
  %13144 = vmatpush1.bf16.msra.mxu0 %v9465
  %13145 = vmatprep.subr.bf16.mxu0 0
  %13146 = vmatpush1.bf16.msra.mxu0 %v9466
  %13147 = vmatprep.mubr.bf16.mxu0 %v3146
  %13148 = vmatmul.mubr.bf16.gmra.mrb[0].mxu0 %v3145
  %v13149 = vpop.f32.mrb[0].mxu0
  %v13150 = vadd.f32 %v13110, %v13149
  %v13151 = vpop.f32.mrb[0].mxu0
  %v13152 = vpop.f32.mrb[0].mxu0
  %v13153 = vpop.f32.mrb[0].mxu0
  %13154 = vdwg.mxu0
  %13155 = vmatprep.subr.bf16.mxu0 0
  %13156 = vmatpush1.bf16.msra.mxu0 %v9467
  %13157 = vmatprep.subr.bf16.mxu0 0
  %13158 = vmatpush1.bf16.msra.mxu0 %v9468
  %13159 = vmatprep.subr.bf16.mxu0 0
  %13160 = vmatpush1.bf16.msra.mxu0 %v9469
  %13161 = vmatprep.subr.bf16.mxu0 0
  %13162 = vmatpush1.bf16.msra.mxu0 %v9470
  %13163 = vmatprep.subr.bf16.mxu0 0
  %13164 = vmatpush1.bf16.msra.mxu0 %v9471
  %13165 = vmatprep.subr.bf16.mxu0 0
  %13166 = vmatpush1.bf16.msra.mxu0 %v9472
  %13167 = vmatprep.subr.bf16.mxu0 0
  %13168 = vmatpush1.bf16.msra.mxu0 %v9473
  %13169 = vmatprep.subr.bf16.mxu0 0
  %13170 = vmatpush1.bf16.msra.mxu0 %v9474
  %13171 = vmatprep.subr.bf16.mxu0 0
  %13172 = vmatpush1.bf16.msra.mxu0 %v9475
  %13173 = vmatprep.subr.bf16.mxu0 0
  %13174 = vmatpush1.bf16.msra.mxu0 %v9476
  %13175 = vmatprep.subr.bf16.mxu0 0
  %13176 = vmatpush1.bf16.msra.mxu0 %v9477
  %13177 = vmatprep.subr.bf16.mxu0 0
  %13178 = vmatpush1.bf16.msra.mxu0 %v9478
  %13179 = vmatprep.subr.bf16.mxu0 0
  %13180 = vmatpush1.bf16.msra.mxu0 %v9479
  %13181 = vmatprep.subr.bf16.mxu0 0
  %13182 = vmatpush1.bf16.msra.mxu0 %v9480
  %13183 = vmatprep.subr.bf16.mxu0 0
  %13184 = vmatpush1.bf16.msra.mxu0 %v9481
  %13185 = vmatprep.subr.bf16.mxu0 0
  %13186 = vmatpush1.bf16.msra.mxu0 %v9482
  %13187 = vmatprep.mubr.bf16.mxu0 %v3148
  %13188 = vmatmul.mubr.bf16.gmra.mrb[0].mxu0 %v3147
  %v13189 = vpop.f32.mrb[0].mxu0
  %v13190 = vadd.f32 %v13150, %v13189
  %v13191 = vpop.f32.mrb[0].mxu0
  %v13192 = vpop.f32.mrb[0].mxu0
  %v13193 = vpop.f32.mrb[0].mxu0
  %13194 = vdwg.mxu0
  %13195 = vmatprep.subr.bf16.mxu0 0
  %13196 = vmatpush1.bf16.msra.mxu0 %v9483
  %13197 = vmatprep.subr.bf16.mxu0 0
  %13198 = vmatpush1.bf16.msra.mxu0 %v9484
  %13199 = vmatprep.subr.bf16.mxu0 0
  %13200 = vmatpush1.bf16.msra.mxu0 %v9485
  %13201 = vmatprep.subr.bf16.mxu0 0
  %13202 = vmatpush1.bf16.msra.mxu0 %v9486
  %13203 = vmatprep.subr.bf16.mxu0 0
  %13204 = vmatpush1.bf16.msra.mxu0 %v9487
  %13205 = vmatprep.subr.bf16.mxu0 0
  %13206 = vmatpush1.bf16.msra.mxu0 %v9488
  %13207 = vmatprep.subr.bf16.mxu0 0
  %13208 = vmatpush1.bf16.msra.mxu0 %v9489
  %13209 = vmatprep.subr.bf16.mxu0 0
  %13210 = vmatpush1.bf16.msra.mxu0 %v9490
  %13211 = vmatprep.subr.bf16.mxu0 0
  %13212 = vmatpush1.bf16.msra.mxu0 %v9491
  %13213 = vmatprep.subr.bf16.mxu0 0
  %13214 = vmatpush1.bf16.msra.mxu0 %v9492
  %13215 = vmatprep.subr.bf16.mxu0 0
  %13216 = vmatpush1.bf16.msra.mxu0 %v9493
  %13217 = vmatprep.subr.bf16.mxu0 0
  %13218 = vmatpush1.bf16.msra.mxu0 %v9494
  %13219 = vmatprep.subr.bf16.mxu0 0
  %13220 = vmatpush1.bf16.msra.mxu0 %v9495
  %13221 = vmatprep.subr.bf16.mxu0 0
  %13222 = vmatpush1.bf16.msra.mxu0 %v9496
  %13223 = vmatprep.subr.bf16.mxu0 0
  %13224 = vmatpush1.bf16.msra.mxu0 %v9497
  %13225 = vmatprep.subr.bf16.mxu0 0
  %13226 = vmatpush1.bf16.msra.mxu0 %v9498
  %13227 = vmatprep.mubr.bf16.mxu0 %v3150
  %13228 = vmatmul.mubr.bf16.gmra.mrb[0].mxu0 %v3149
  %v13229 = vpop.f32.mrb[0].mxu0
  %v13230 = vadd.f32 %v13190, %v13229
  %v13231 = vpop.f32.mrb[0].mxu0
  %v13232 = vpop.f32.mrb[0].mxu0
  %v13233 = vpop.f32.mrb[0].mxu0
  %13234 = vdwg.mxu0
  %13235 = vmatprep.subr.bf16.mxu0 0
  %13236 = vmatpush1.bf16.msra.mxu0 %v9499
  %13237 = vmatprep.subr.bf16.mxu0 0
  %13238 = vmatpush1.bf16.msra.mxu0 %v9500
  %13239 = vmatprep.subr.bf16.mxu0 0
  %13240 = vmatpush1.bf16.msra.mxu0 %v9501
  %13241 = vmatprep.subr.bf16.mxu0 0
  %13242 = vmatpush1.bf16.msra.mxu0 %v9502
  %13243 = vmatprep.subr.bf16.mxu0 0
  %13244 = vmatpush1.bf16.msra.mxu0 %v9503
  %13245 = vmatprep.subr.bf16.mxu0 0
  %13246 = vmatpush1.bf16.msra.mxu0 %v9504
  %13247 = vmatprep.subr.bf16.mxu0 0
  %13248 = vmatpush1.bf16.msra.mxu0 %v9505
  %13249 = vmatprep.subr.bf16.mxu0 0
  %13250 = vmatpush1.bf16.msra.mxu0 %v9506
  %13251 = vmatprep.subr.bf16.mxu0 0
  %13252 = vmatpush1.bf16.msra.mxu0 %v9507
  %13253 = vmatprep.subr.bf16.mxu0 0
  %13254 = vmatpush1.bf16.msra.mxu0 %v9508
  %13255 = vmatprep.subr.bf16.mxu0 0
  %13256 = vmatpush1.bf16.msra.mxu0 %v9509
  %13257 = vmatprep.subr.bf16.mxu0 0
  %13258 = vmatpush1.bf16.msra.mxu0 %v9510
  %13259 = vmatprep.subr.bf16.mxu0 0
  %13260 = vmatpush1.bf16.msra.mxu0 %v9511
  %13261 = vmatprep.subr.bf16.mxu0 0
  %13262 = vmatpush1.bf16.msra.mxu0 %v9512
  %13263 = vmatprep.subr.bf16.mxu0 0
  %13264 = vmatpush1.bf16.msra.mxu0 %v9513
  %13265 = vmatprep.subr.bf16.mxu0 0
  %13266 = vmatpush1.bf16.msra.mxu0 %v9514
  %13267 = vmatprep.mubr.bf16.mxu0 %v3152
  %13268 = vmatmul.mubr.bf16.gmra.mrb[0].mxu0 %v3151
  %v13269 = vpop.f32.mrb[0].mxu0
  %v13270 = vadd.f32 %v13230, %v13269
  %v13271 = vpop.f32.mrb[0].mxu0
  %v13272 = vpop.f32.mrb[0].mxu0
  %v13273 = vpop.f32.mrb[0].mxu0
  %13274 = vdwg.mxu0
  %13275 = vmatprep.subr.bf16.mxu0 0
  %13276 = vmatpush1.bf16.msra.mxu0 %v9515
  %13277 = vmatprep.subr.bf16.mxu0 0
  %13278 = vmatpush1.bf16.msra.mxu0 %v9516
  %13279 = vmatprep.subr.bf16.mxu0 0
  %13280 = vmatpush1.bf16.msra.mxu0 %v9517
  %13281 = vmatprep.subr.bf16.mxu0 0
  %13282 = vmatpush1.bf16.msra.mxu0 %v9518
  %13283 = vmatprep.subr.bf16.mxu0 0
  %13284 = vmatpush1.bf16.msra.mxu0 %v9519
  %13285 = vmatprep.subr.bf16.mxu0 0
  %13286 = vmatpush1.bf16.msra.mxu0 %v9520
  %13287 = vmatprep.subr.bf16.mxu0 0
  %13288 = vmatpush1.bf16.msra.mxu0 %v9521
  %13289 = vmatprep.subr.bf16.mxu0 0
  %13290 = vmatpush1.bf16.msra.mxu0 %v9522
  %13291 = vmatprep.subr.bf16.mxu0 0
  %13292 = vmatpush1.bf16.msra.mxu0 %v9523
  %13293 = vmatprep.subr.bf16.mxu0 0
  %13294 = vmatpush1.bf16.msra.mxu0 %v9524
  %13295 = vmatprep.subr.bf16.mxu0 0
  %13296 = vmatpush1.bf16.msra.mxu0 %v9525
  %13297 = vmatprep.subr.bf16.mxu0 0
  %13298 = vmatpush1.bf16.msra.mxu0 %v9526
  %13299 = vmatprep.subr.bf16.mxu0 0
  %13300 = vmatpush1.bf16.msra.mxu0 %v9527
  %13301 = vmatprep.subr.bf16.mxu0 0
  %13302 = vmatpush1.bf16.msra.mxu0 %v9528
  %13303 = vmatprep.subr.bf16.mxu0 0
  %13304 = vmatpush1.bf16.msra.mxu0 %v9529
  %13305 = vmatprep.subr.bf16.mxu0 0
  %13306 = vmatpush1.bf16.msra.mxu0 %v9530
  %13307 = vmatprep.mubr.bf16.mxu0 %v3154
  %13308 = vmatmul.mubr.bf16.gmra.mrb[0].mxu0 %v3153
  %v13309 = vpop.f32.mrb[0].mxu0
  %v13310 = vadd.f32 %v13270, %v13309
  %v13311 = vpop.f32.mrb[0].mxu0
  %v13312 = vpop.f32.mrb[0].mxu0
  %v13313 = vpop.f32.mrb[0].mxu0
  %13314 = vdwg.mxu0
  %13315 = vmatprep.subr.bf16.mxu0 0
  %13316 = vmatpush1.bf16.msra.mxu0 %v9531
  %13317 = vmatprep.subr.bf16.mxu0 0
  %13318 = vmatpush1.bf16.msra.mxu0 %v9532
  %13319 = vmatprep.subr.bf16.mxu0 0
  %13320 = vmatpush1.bf16.msra.mxu0 %v9533
  %13321 = vmatprep.subr.bf16.mxu0 0
  %13322 = vmatpush1.bf16.msra.mxu0 %v9534
  %13323 = vmatprep.subr.bf16.mxu0 0
  %13324 = vmatpush1.bf16.msra.mxu0 %v9535
  %13325 = vmatprep.subr.bf16.mxu0 0
  %13326 = vmatpush1.bf16.msra.mxu0 %v9536
  %13327 = vmatprep.subr.bf16.mxu0 0
  %13328 = vmatpush1.bf16.msra.mxu0 %v9537
  %13329 = vmatprep.subr.bf16.mxu0 0
  %13330 = vmatpush1.bf16.msra.mxu0 %v9538
  %13331 = vmatprep.subr.bf16.mxu0 0
  %13332 = vmatpush1.bf16.msra.mxu0 %v9539
  %13333 = vmatprep.subr.bf16.mxu0 0
  %13334 = vmatpush1.bf16.msra.mxu0 %v9540
  %13335 = vmatprep.subr.bf16.mxu0 0
  %13336 = vmatpush1.bf16.msra.mxu0 %v9541
  %13337 = vmatprep.subr.bf16.mxu0 0
  %13338 = vmatpush1.bf16.msra.mxu0 %v9542
  %13339 = vmatprep.subr.bf16.mxu0 0
  %13340 = vmatpush1.bf16.msra.mxu0 %v9543
  %13341 = vmatprep.subr.bf16.mxu0 0
  %13342 = vmatpush1.bf16.msra.mxu0 %v9544
  %13343 = vmatprep.subr.bf16.mxu0 0
  %13344 = vmatpush1.bf16.msra.mxu0 %v9545
  %13345 = vmatprep.subr.bf16.mxu0 0
  %13346 = vmatpush1.bf16.msra.mxu0 %v9546
  %13347 = vmatprep.mubr.bf16.mxu0 %v3156
  %13348 = vmatmul.mubr.bf16.gmra.mrb[0].mxu0 %v3155
  %v13349 = vpop.f32.mrb[0].mxu0
  %v13350 = vadd.f32 %v13310, %v13349
  %v13351 = vpop.f32.mrb[0].mxu0
  %v13352 = vpop.f32.mrb[0].mxu0
  %v13353 = vpop.f32.mrb[0].mxu0
  %13354 = vdwg.mxu0
  %13355 = vmatprep.subr.bf16.mxu0 0
  %13356 = vmatpush1.bf16.msra.mxu0 %v9547
  %13357 = vmatprep.subr.bf16.mxu0 0
  %13358 = vmatpush1.bf16.msra.mxu0 %v9548
  %13359 = vmatprep.subr.bf16.mxu0 0
  %13360 = vmatpush1.bf16.msra.mxu0 %v9549
  %13361 = vmatprep.subr.bf16.mxu0 0
  %13362 = vmatpush1.bf16.msra.mxu0 %v9550
  %13363 = vmatprep.subr.bf16.mxu0 0
  %13364 = vmatpush1.bf16.msra.mxu0 %v9551
  %13365 = vmatprep.subr.bf16.mxu0 0
  %13366 = vmatpush1.bf16.msra.mxu0 %v9552
  %13367 = vmatprep.subr.bf16.mxu0 0
  %13368 = vmatpush1.bf16.msra.mxu0 %v9553
  %13369 = vmatprep.subr.bf16.mxu0 0
  %13370 = vmatpush1.bf16.msra.mxu0 %v9554
  %13371 = vmatprep.subr.bf16.mxu0 0
  %13372 = vmatpush1.bf16.msra.mxu0 %v9555
  %13373 = vmatprep.subr.bf16.mxu0 0
  %13374 = vmatpush1.bf16.msra.mxu0 %v9556
  %13375 = vmatprep.subr.bf16.mxu0 0
  %13376 = vmatpush1.bf16.msra.mxu0 %v9557
  %13377 = vmatprep.subr.bf16.mxu0 0
  %13378 = vmatpush1.bf16.msra.mxu0 %v9558
  %13379 = vmatprep.subr.bf16.mxu0 0
  %13380 = vmatpush1.bf16.msra.mxu0 %v9559
  %13381 = vmatprep.subr.bf16.mxu0 0
  %13382 = vmatpush1.bf16.msra.mxu0 %v9560
  %13383 = vmatprep.subr.bf16.mxu0 0
  %13384 = vmatpush1.bf16.msra.mxu0 %v9561
  %13385 = vmatprep.subr.bf16.mxu0 0
  %13386 = vmatpush1.bf16.msra.mxu0 %v9562
  %13387 = vmatprep.mubr.bf16.mxu0 %v3158
  %13388 = vmatmul.mubr.bf16.gmra.mrb[0].mxu0 %v3157
  %v13389 = vpop.f32.mrb[0].mxu0
  %v13390 = vadd.f32 %v13350, %v13389
  %v13391 = vpop.f32.mrb[0].mxu0
  %v13392 = vpop.f32.mrb[0].mxu0
  %v13393 = vpop.f32.mrb[0].mxu0
  %13394 = vdwg.mxu0
  %13395 = vmatprep.subr.bf16.mxu0 0
  %13396 = vmatpush1.bf16.msra.mxu0 %v9563
  %13397 = vmatprep.subr.bf16.mxu0 0
  %13398 = vmatpush1.bf16.msra.mxu0 %v9564
  %13399 = vmatprep.subr.bf16.mxu0 0
  %13400 = vmatpush1.bf16.msra.mxu0 %v9565
  %13401 = vmatprep.subr.bf16.mxu0 0
  %13402 = vmatpush1.bf16.msra.mxu0 %v9566
  %13403 = vmatprep.subr.bf16.mxu0 0
  %13404 = vmatpush1.bf16.msra.mxu0 %v9567
  %13405 = vmatprep.subr.bf16.mxu0 0
  %13406 = vmatpush1.bf16.msra.mxu0 %v9568
  %13407 = vmatprep.subr.bf16.mxu0 0
  %13408 = vmatpush1.bf16.msra.mxu0 %v9569
  %13409 = vmatprep.subr.bf16.mxu0 0
  %13410 = vmatpush1.bf16.msra.mxu0 %v9570
  %13411 = vmatprep.subr.bf16.mxu0 0
  %13412 = vmatpush1.bf16.msra.mxu0 %v9571
  %13413 = vmatprep.subr.bf16.mxu0 0
  %13414 = vmatpush1.bf16.msra.mxu0 %v9572
  %13415 = vmatprep.subr.bf16.mxu0 0
  %13416 = vmatpush1.bf16.msra.mxu0 %v9573
  %13417 = vmatprep.subr.bf16.mxu0 0
  %13418 = vmatpush1.bf16.msra.mxu0 %v9574
  %13419 = vmatprep.subr.bf16.mxu0 0
  %13420 = vmatpush1.bf16.msra.mxu0 %v9575
  %13421 = vmatprep.subr.bf16.mxu0 0
  %13422 = vmatpush1.bf16.msra.mxu0 %v9576
  %13423 = vmatprep.subr.bf16.mxu0 0
  %13424 = vmatpush1.bf16.msra.mxu0 %v9577
  %13425 = vmatprep.subr.bf16.mxu0 0
  %13426 = vmatpush1.bf16.msra.mxu0 %v9578
  %13427 = vmatprep.mubr.bf16.mxu0 %v3160
  %13428 = vmatmul.mubr.bf16.gmra.mrb[0].mxu0 %v3159
  %v13429 = vpop.f32.mrb[0].mxu0
  %v13430 = vadd.f32 %v13390, %v13429
  %v13431 = vpop.f32.mrb[0].mxu0
  %v13432 = vpop.f32.mrb[0].mxu0
  %v13433 = vpop.f32.mrb[0].mxu0
  %13434 = vdwg.mxu0
  %13435 = vmatprep.subr.bf16.mxu0 0
  %13436 = vmatpush1.bf16.msra.mxu0 %v9579
  %13437 = vmatprep.subr.bf16.mxu0 0
  %13438 = vmatpush1.bf16.msra.mxu0 %v9580
  %13439 = vmatprep.subr.bf16.mxu0 0
  %13440 = vmatpush1.bf16.msra.mxu0 %v9581
  %13441 = vmatprep.subr.bf16.mxu0 0
  %13442 = vmatpush1.bf16.msra.mxu0 %v9582
  %13443 = vmatprep.subr.bf16.mxu0 0
  %13444 = vmatpush1.bf16.msra.mxu0 %v9583
  %13445 = vmatprep.subr.bf16.mxu0 0
  %13446 = vmatpush1.bf16.msra.mxu0 %v9584
  %13447 = vmatprep.subr.bf16.mxu0 0
  %13448 = vmatpush1.bf16.msra.mxu0 %v9585
  %13449 = vmatprep.subr.bf16.mxu0 0
  %13450 = vmatpush1.bf16.msra.mxu0 %v9586
  %13451 = vmatprep.subr.bf16.mxu0 0
  %13452 = vmatpush1.bf16.msra.mxu0 %v9587
  %13453 = vmatprep.subr.bf16.mxu0 0
  %13454 = vmatpush1.bf16.msra.mxu0 %v9588
  %13455 = vmatprep.subr.bf16.mxu0 0
  %13456 = vmatpush1.bf16.msra.mxu0 %v9589
  %13457 = vmatprep.subr.bf16.mxu0 0
  %13458 = vmatpush1.bf16.msra.mxu0 %v9590
  %13459 = vmatprep.subr.bf16.mxu0 0
  %13460 = vmatpush1.bf16.msra.mxu0 %v9591
  %13461 = vmatprep.subr.bf16.mxu0 0
  %13462 = vmatpush1.bf16.msra.mxu0 %v9592
  %13463 = vmatprep.subr.bf16.mxu0 0
  %13464 = vmatpush1.bf16.msra.mxu0 %v9593
  %13465 = vmatprep.subr.bf16.mxu0 0
  %13466 = vmatpush1.bf16.msra.mxu0 %v9594
  %13467 = vmatprep.mubr.bf16.mxu0 %v3162
  %13468 = vmatmul.mubr.bf16.gmra.mrb[0].mxu0 %v3161
  %v13469 = vpop.f32.mrb[0].mxu0
  %v13470 = vadd.f32 %v13430, %v13469
  %v13471 = vpop.f32.mrb[0].mxu0
  %v13472 = vpop.f32.mrb[0].mxu0
  %v13473 = vpop.f32.mrb[0].mxu0
  %13474 = vdwg.mxu0
  %13475 = vmatprep.subr.bf16.mxu0 0
  %13476 = vmatpush1.bf16.msra.mxu0 %v9595
  %13477 = vmatprep.subr.bf16.mxu0 0
  %13478 = vmatpush1.bf16.msra.mxu0 %v9596
  %13479 = vmatprep.subr.bf16.mxu0 0
  %13480 = vmatpush1.bf16.msra.mxu0 %v9597
  %13481 = vmatprep.subr.bf16.mxu0 0
  %13482 = vmatpush1.bf16.msra.mxu0 %v9598
  %13483 = vmatprep.subr.bf16.mxu0 0
  %13484 = vmatpush1.bf16.msra.mxu0 %v9599
  %13485 = vmatprep.subr.bf16.mxu0 0
  %13486 = vmatpush1.bf16.msra.mxu0 %v9600
  %13487 = vmatprep.subr.bf16.mxu0 0
  %13488 = vmatpush1.bf16.msra.mxu0 %v9601
  %13489 = vmatprep.subr.bf16.mxu0 0
  %13490 = vmatpush1.bf16.msra.mxu0 %v9602
  %13491 = vmatprep.subr.bf16.mxu0 0
  %13492 = vmatpush1.bf16.msra.mxu0 %v9603
  %13493 = vmatprep.subr.bf16.mxu0 0
  %13494 = vmatpush1.bf16.msra.mxu0 %v9604
  %13495 = vmatprep.subr.bf16.mxu0 0
  %13496 = vmatpush1.bf16.msra.mxu0 %v9605
  %13497 = vmatprep.subr.bf16.mxu0 0
  %13498 = vmatpush1.bf16.msra.mxu0 %v9606
  %13499 = vmatprep.subr.bf16.mxu0 0
  %13500 = vmatpush1.bf16.msra.mxu0 %v9607
  %13501 = vmatprep.subr.bf16.mxu0 0
  %13502 = vmatpush1.bf16.msra.mxu0 %v9608
  %13503 = vmatprep.subr.bf16.mxu0 0
  %13504 = vmatpush1.bf16.msra.mxu0 %v9609
  %13505 = vmatprep.subr.bf16.mxu0 0
  %13506 = vmatpush1.bf16.msra.mxu0 %v9610
  %13507 = vmatprep.mubr.bf16.mxu0 %v3164
  %13508 = vmatmul.mubr.bf16.gmra.mrb[0].mxu0 %v3163
  %v13509 = vpop.f32.mrb[0].mxu0
  %v13510 = vadd.f32 %v13470, %v13509
  %v13511 = vpop.f32.mrb[0].mxu0
  %v13512 = vpop.f32.mrb[0].mxu0
  %v13513 = vpop.f32.mrb[0].mxu0
  %13514 = vdwg.mxu0
  %13515 = vmatprep.subr.bf16.mxu0 0
  %13516 = vmatpush1.bf16.msra.mxu0 %v9611
  %13517 = vmatprep.subr.bf16.mxu0 0
  %13518 = vmatpush1.bf16.msra.mxu0 %v9612
  %13519 = vmatprep.subr.bf16.mxu0 0
  %13520 = vmatpush1.bf16.msra.mxu0 %v9613
  %13521 = vmatprep.subr.bf16.mxu0 0
  %13522 = vmatpush1.bf16.msra.mxu0 %v9614
  %13523 = vmatprep.subr.bf16.mxu0 0
  %13524 = vmatpush1.bf16.msra.mxu0 %v9615
  %13525 = vmatprep.subr.bf16.mxu0 0
  %13526 = vmatpush1.bf16.msra.mxu0 %v9616
  %13527 = vmatprep.subr.bf16.mxu0 0
  %13528 = vmatpush1.bf16.msra.mxu0 %v9617
  %13529 = vmatprep.subr.bf16.mxu0 0
  %13530 = vmatpush1.bf16.msra.mxu0 %v9618
  %13531 = vmatprep.subr.bf16.mxu0 0
  %13532 = vmatpush1.bf16.msra.mxu0 %v9619
  %13533 = vmatprep.subr.bf16.mxu0 0
  %13534 = vmatpush1.bf16.msra.mxu0 %v9620
  %13535 = vmatprep.subr.bf16.mxu0 0
  %13536 = vmatpush1.bf16.msra.mxu0 %v9621
  %13537 = vmatprep.subr.bf16.mxu0 0
  %13538 = vmatpush1.bf16.msra.mxu0 %v9622
  %13539 = vmatprep.subr.bf16.mxu0 0
  %13540 = vmatpush1.bf16.msra.mxu0 %v9623
  %13541 = vmatprep.subr.bf16.mxu0 0
  %13542 = vmatpush1.bf16.msra.mxu0 %v9624
  %13543 = vmatprep.subr.bf16.mxu0 0
  %13544 = vmatpush1.bf16.msra.mxu0 %v9625
  %13545 = vmatprep.subr.bf16.mxu0 0
  %13546 = vmatpush1.bf16.msra.mxu0 %v9626
  %13547 = vmatprep.mubr.bf16.mxu0 %v3166
  %13548 = vmatmul.mubr.bf16.gmra.mrb[0].mxu0 %v3165
  %v13549 = vpop.f32.mrb[0].mxu0
  %v13550 = vadd.f32 %v13510, %v13549
  %v13551 = vpop.f32.mrb[0].mxu0
  %v13552 = vpop.f32.mrb[0].mxu0
  %v13553 = vpop.f32.mrb[0].mxu0
  %13554 = vdwg.mxu0
  %13555 = vmatprep.subr.bf16.mxu0 0
  %13556 = vmatpush1.bf16.msra.mxu0 %v9627
  %13557 = vmatprep.subr.bf16.mxu0 0
  %13558 = vmatpush1.bf16.msra.mxu0 %v9628
  %13559 = vmatprep.subr.bf16.mxu0 0
  %13560 = vmatpush1.bf16.msra.mxu0 %v9629
  %13561 = vmatprep.subr.bf16.mxu0 0
  %13562 = vmatpush1.bf16.msra.mxu0 %v9630
  %13563 = vmatprep.subr.bf16.mxu0 0
  %13564 = vmatpush1.bf16.msra.mxu0 %v9631
  %13565 = vmatprep.subr.bf16.mxu0 0
  %13566 = vmatpush1.bf16.msra.mxu0 %v9632
  %13567 = vmatprep.subr.bf16.mxu0 0
  %13568 = vmatpush1.bf16.msra.mxu0 %v9633
  %13569 = vmatprep.subr.bf16.mxu0 0
  %13570 = vmatpush1.bf16.msra.mxu0 %v9634
  %13571 = vmatprep.subr.bf16.mxu0 0
  %13572 = vmatpush1.bf16.msra.mxu0 %v9635
  %13573 = vmatprep.subr.bf16.mxu0 0
  %13574 = vmatpush1.bf16.msra.mxu0 %v9636
  %13575 = vmatprep.subr.bf16.mxu0 0
  %13576 = vmatpush1.bf16.msra.mxu0 %v9637
  %13577 = vmatprep.subr.bf16.mxu0 0
  %13578 = vmatpush1.bf16.msra.mxu0 %v9638
  %13579 = vmatprep.subr.bf16.mxu0 0
  %13580 = vmatpush1.bf16.msra.mxu0 %v9639
  %13581 = vmatprep.subr.bf16.mxu0 0
  %13582 = vmatpush1.bf16.msra.mxu0 %v9640
  %13583 = vmatprep.subr.bf16.mxu0 0
  %13584 = vmatpush1.bf16.msra.mxu0 %v9641
  %13585 = vmatprep.subr.bf16.mxu0 0
  %13586 = vmatpush1.bf16.msra.mxu0 %v9642
  %13587 = vmatprep.mubr.bf16.mxu0 %v3168
  %13588 = vmatmul.mubr.bf16.gmra.mrb[0].mxu0 %v3167
  %v13589 = vpop.f32.mrb[0].mxu0
  %v13590 = vadd.f32 %v13550, %v13589
  %v13591 = vpop.f32.mrb[0].mxu0
  %v13592 = vpop.f32.mrb[0].mxu0
  %v13593 = vpop.f32.mrb[0].mxu0
  %13594 = vdwg.mxu0
  %13595 = vmatprep.subr.bf16.mxu0 0
  %13596 = vmatpush1.bf16.msra.mxu0 %v9643
  %13597 = vmatprep.subr.bf16.mxu0 0
  %13598 = vmatpush1.bf16.msra.mxu0 %v9644
  %13599 = vmatprep.subr.bf16.mxu0 0
  %13600 = vmatpush1.bf16.msra.mxu0 %v9645
  %13601 = vmatprep.subr.bf16.mxu0 0
  %13602 = vmatpush1.bf16.msra.mxu0 %v9646
  %13603 = vmatprep.subr.bf16.mxu0 0
  %13604 = vmatpush1.bf16.msra.mxu0 %v9647
  %13605 = vmatprep.subr.bf16.mxu0 0
  %13606 = vmatpush1.bf16.msra.mxu0 %v9648
  %13607 = vmatprep.subr.bf16.mxu0 0
  %13608 = vmatpush1.bf16.msra.mxu0 %v9649
  %13609 = vmatprep.subr.bf16.mxu0 0
  %13610 = vmatpush1.bf16.msra.mxu0 %v9650
  %13611 = vmatprep.subr.bf16.mxu0 0
  %13612 = vmatpush1.bf16.msra.mxu0 %v9651
  %13613 = vmatprep.subr.bf16.mxu0 0
  %13614 = vmatpush1.bf16.msra.mxu0 %v9652
  %13615 = vmatprep.subr.bf16.mxu0 0
  %13616 = vmatpush1.bf16.msra.mxu0 %v9653
  %13617 = vmatprep.subr.bf16.mxu0 0
  %13618 = vmatpush1.bf16.msra.mxu0 %v9654
  %13619 = vmatprep.subr.bf16.mxu0 0
  %13620 = vmatpush1.bf16.msra.mxu0 %v9655
  %13621 = vmatprep.subr.bf16.mxu0 0
  %13622 = vmatpush1.bf16.msra.mxu0 %v9656
  %13623 = vmatprep.subr.bf16.mxu0 0
  %13624 = vmatpush1.bf16.msra.mxu0 %v9657
  %13625 = vmatprep.subr.bf16.mxu0 0
  %13626 = vmatpush1.bf16.msra.mxu0 %v9658
  %13627 = vmatprep.mubr.bf16.mxu0 %v3170
  %13628 = vmatmul.mubr.bf16.gmra.mrb[0].mxu0 %v3169
  %v13629 = vpop.f32.mrb[0].mxu0
  %v13630 = vadd.f32 %v13590, %v13629
  %v13631 = vpop.f32.mrb[0].mxu0
  %v13632 = vpop.f32.mrb[0].mxu0
  %v13633 = vpop.f32.mrb[0].mxu0
  %13634 = vdwg.mxu0
  %13635 = vmatprep.subr.bf16.mxu0 0
  %13636 = vmatpush1.bf16.msra.mxu0 %v9659
  %13637 = vmatprep.subr.bf16.mxu0 0
  %13638 = vmatpush1.bf16.msra.mxu0 %v9660
  %13639 = vmatprep.subr.bf16.mxu0 0
  %13640 = vmatpush1.bf16.msra.mxu0 %v9661
  %13641 = vmatprep.subr.bf16.mxu0 0
  %13642 = vmatpush1.bf16.msra.mxu0 %v9662
  %13643 = vmatprep.subr.bf16.mxu0 0
  %13644 = vmatpush1.bf16.msra.mxu0 %v9663
  %13645 = vmatprep.subr.bf16.mxu0 0
  %13646 = vmatpush1.bf16.msra.mxu0 %v9664
  %13647 = vmatprep.subr.bf16.mxu0 0
  %13648 = vmatpush1.bf16.msra.mxu0 %v9665
  %13649 = vmatprep.subr.bf16.mxu0 0
  %13650 = vmatpush1.bf16.msra.mxu0 %v9666
  %13651 = vmatprep.subr.bf16.mxu0 0
  %13652 = vmatpush1.bf16.msra.mxu0 %v9667
  %13653 = vmatprep.subr.bf16.mxu0 0
  %13654 = vmatpush1.bf16.msra.mxu0 %v9668
  %13655 = vmatprep.subr.bf16.mxu0 0
  %13656 = vmatpush1.bf16.msra.mxu0 %v9669
  %13657 = vmatprep.subr.bf16.mxu0 0
  %13658 = vmatpush1.bf16.msra.mxu0 %v9670
  %13659 = vmatprep.subr.bf16.mxu0 0
  %13660 = vmatpush1.bf16.msra.mxu0 %v9671
  %13661 = vmatprep.subr.bf16.mxu0 0
  %13662 = vmatpush1.bf16.msra.mxu0 %v9672
  %13663 = vmatprep.subr.bf16.mxu0 0
  %13664 = vmatpush1.bf16.msra.mxu0 %v9673
  %13665 = vmatprep.subr.bf16.mxu0 0
  %13666 = vmatpush1.bf16.msra.mxu0 %v9674
  %13667 = vmatprep.mubr.bf16.mxu0 %v3172
  %13668 = vmatmul.mubr.bf16.gmra.mrb[0].mxu0 %v3171
  %v13669 = vpop.f32.mrb[0].mxu0
  %v13670 = vadd.f32 %v13630, %v13669
  %v13671 = vpop.f32.mrb[0].mxu0
  %v13672 = vpop.f32.mrb[0].mxu0
  %v13673 = vpop.f32.mrb[0].mxu0
  %13674 = vdwg.mxu0
  %13675 = vmatprep.subr.bf16.mxu0 0
  %13676 = vmatpush1.bf16.msra.mxu0 %v9675
  %13677 = vmatprep.subr.bf16.mxu0 0
  %13678 = vmatpush1.bf16.msra.mxu0 %v9676
  %13679 = vmatprep.subr.bf16.mxu0 0
  %13680 = vmatpush1.bf16.msra.mxu0 %v9677
  %13681 = vmatprep.subr.bf16.mxu0 0
  %13682 = vmatpush1.bf16.msra.mxu0 %v9678
  %13683 = vmatprep.subr.bf16.mxu0 0
  %13684 = vmatpush1.bf16.msra.mxu0 %v9679
  %13685 = vmatprep.subr.bf16.mxu0 0
  %13686 = vmatpush1.bf16.msra.mxu0 %v9680
  %13687 = vmatprep.subr.bf16.mxu0 0
  %13688 = vmatpush1.bf16.msra.mxu0 %v9681
  %13689 = vmatprep.subr.bf16.mxu0 0
  %13690 = vmatpush1.bf16.msra.mxu0 %v9682
  %13691 = vmatprep.subr.bf16.mxu0 0
  %13692 = vmatpush1.bf16.msra.mxu0 %v9683
  %13693 = vmatprep.subr.bf16.mxu0 0
  %13694 = vmatpush1.bf16.msra.mxu0 %v9684
  %13695 = vmatprep.subr.bf16.mxu0 0
  %13696 = vmatpush1.bf16.msra.mxu0 %v9685
  %13697 = vmatprep.subr.bf16.mxu0 0
  %13698 = vmatpush1.bf16.msra.mxu0 %v9686
  %13699 = vmatprep.subr.bf16.mxu0 0
  %13700 = vmatpush1.bf16.msra.mxu0 %v9687
  %13701 = vmatprep.subr.bf16.mxu0 0
  %13702 = vmatpush1.bf16.msra.mxu0 %v9688
  %13703 = vmatprep.subr.bf16.mxu0 0
  %13704 = vmatpush1.bf16.msra.mxu0 %v9689
  %13705 = vmatprep.subr.bf16.mxu0 0
  %13706 = vmatpush1.bf16.msra.mxu0 %v9690
  %13707 = vmatprep.mubr.bf16.mxu0 %v3174
  %13708 = vmatmul.mubr.bf16.gmra.mrb[0].mxu0 %v3173
  %v13709 = vpop.f32.mrb[0].mxu0
  %v13710 = vadd.f32 %v13670, %v13709
  %v13711 = vpop.f32.mrb[0].mxu0
  %v13712 = vpop.f32.mrb[0].mxu0
  %v13713 = vpop.f32.mrb[0].mxu0
  %13714 = vdwg.mxu0
  %13715 = vmatprep.subr.bf16.mxu0 0
  %13716 = vmatpush1.bf16.msra.mxu0 %v9691
  %13717 = vmatprep.subr.bf16.mxu0 0
  %13718 = vmatpush1.bf16.msra.mxu0 %v9692
  %13719 = vmatprep.subr.bf16.mxu0 0
  %13720 = vmatpush1.bf16.msra.mxu0 %v9693
  %13721 = vmatprep.subr.bf16.mxu0 0
  %13722 = vmatpush1.bf16.msra.mxu0 %v9694
  %13723 = vmatprep.subr.bf16.mxu0 0
  %13724 = vmatpush1.bf16.msra.mxu0 %v9695
  %13725 = vmatprep.subr.bf16.mxu0 0
  %13726 = vmatpush1.bf16.msra.mxu0 %v9696
  %13727 = vmatprep.subr.bf16.mxu0 0
  %13728 = vmatpush1.bf16.msra.mxu0 %v9697
  %13729 = vmatprep.subr.bf16.mxu0 0
  %13730 = vmatpush1.bf16.msra.mxu0 %v9698
  %13731 = vmatprep.subr.bf16.mxu0 0
  %13732 = vmatpush1.bf16.msra.mxu0 %v9699
  %13733 = vmatprep.subr.bf16.mxu0 0
  %13734 = vmatpush1.bf16.msra.mxu0 %v9700
  %13735 = vmatprep.subr.bf16.mxu0 0
  %13736 = vmatpush1.bf16.msra.mxu0 %v9701
  %13737 = vmatprep.subr.bf16.mxu0 0
  %13738 = vmatpush1.bf16.msra.mxu0 %v9702
  %13739 = vmatprep.subr.bf16.mxu0 0
  %13740 = vmatpush1.bf16.msra.mxu0 %v9703
  %13741 = vmatprep.subr.bf16.mxu0 0
  %13742 = vmatpush1.bf16.msra.mxu0 %v9704
  %13743 = vmatprep.subr.bf16.mxu0 0
  %13744 = vmatpush1.bf16.msra.mxu0 %v9705
  %13745 = vmatprep.subr.bf16.mxu0 0
  %13746 = vmatpush1.bf16.msra.mxu0 %v9706
  %13747 = vmatprep.mubr.bf16.mxu0 %v3176
  %13748 = vmatmul.mubr.bf16.gmra.mrb[0].mxu0 %v3175
  %v13749 = vpop.f32.mrb[0].mxu0
  %v13750 = vadd.f32 %v13710, %v13749
  %v13751 = vpop.f32.mrb[0].mxu0
  %v13752 = vpop.f32.mrb[0].mxu0
  %v13753 = vpop.f32.mrb[0].mxu0
  %13754 = vdwg.mxu0
  %13755 = vmatprep.subr.bf16.mxu0 0
  %13756 = vmatpush1.bf16.msra.mxu0 %v9707
  %13757 = vmatprep.subr.bf16.mxu0 0
  %13758 = vmatpush1.bf16.msra.mxu0 %v9708
  %13759 = vmatprep.subr.bf16.mxu0 0
  %13760 = vmatpush1.bf16.msra.mxu0 %v9709
  %13761 = vmatprep.subr.bf16.mxu0 0
  %13762 = vmatpush1.bf16.msra.mxu0 %v9710
  %13763 = vmatprep.subr.bf16.mxu0 0
  %13764 = vmatpush1.bf16.msra.mxu0 %v9711
  %13765 = vmatprep.subr.bf16.mxu0 0
  %13766 = vmatpush1.bf16.msra.mxu0 %v9712
  %13767 = vmatprep.subr.bf16.mxu0 0
  %13768 = vmatpush1.bf16.msra.mxu0 %v9713
  %13769 = vmatprep.subr.bf16.mxu0 0
  %13770 = vmatpush1.bf16.msra.mxu0 %v9714
  %13771 = vmatprep.subr.bf16.mxu0 0
  %13772 = vmatpush1.bf16.msra.mxu0 %v9715
  %13773 = vmatprep.subr.bf16.mxu0 0
  %13774 = vmatpush1.bf16.msra.mxu0 %v9716
  %13775 = vmatprep.subr.bf16.mxu0 0
  %13776 = vmatpush1.bf16.msra.mxu0 %v9717
  %13777 = vmatprep.subr.bf16.mxu0 0
  %13778 = vmatpush1.bf16.msra.mxu0 %v9718
  %13779 = vmatprep.subr.bf16.mxu0 0
  %13780 = vmatpush1.bf16.msra.mxu0 %v9719
  %13781 = vmatprep.subr.bf16.mxu0 0
  %13782 = vmatpush1.bf16.msra.mxu0 %v9720
  %13783 = vmatprep.subr.bf16.mxu0 0
  %13784 = vmatpush1.bf16.msra.mxu0 %v9721
  %13785 = vmatprep.subr.bf16.mxu0 0
  %13786 = vmatpush1.bf16.msra.mxu0 %v9722
  %13787 = vmatprep.mubr.bf16.mxu0 %v3178
  %13788 = vmatmul.mubr.bf16.gmra.mrb[0].mxu0 %v3177
  %v13789 = vpop.f32.mrb[0].mxu0
  %v13790 = vadd.f32 %v13750, %v13789
  %v13791 = vpop.f32.mrb[0].mxu0
  %v13792 = vpop.f32.mrb[0].mxu0
  %v13793 = vpop.f32.mrb[0].mxu0
  %13794 = vdwg.mxu0
  %13795 = vmatprep.subr.bf16.mxu0 0
  %13796 = vmatpush1.bf16.msra.mxu0 %v9723
  %13797 = vmatprep.subr.bf16.mxu0 0
  %13798 = vmatpush1.bf16.msra.mxu0 %v9724
  %13799 = vmatprep.subr.bf16.mxu0 0
  %13800 = vmatpush1.bf16.msra.mxu0 %v9725
  %13801 = vmatprep.subr.bf16.mxu0 0
  %13802 = vmatpush1.bf16.msra.mxu0 %v9726
  %13803 = vmatprep.subr.bf16.mxu0 0
  %13804 = vmatpush1.bf16.msra.mxu0 %v9727
  %13805 = vmatprep.subr.bf16.mxu0 0
  %13806 = vmatpush1.bf16.msra.mxu0 %v9728
  %13807 = vmatprep.subr.bf16.mxu0 0
  %13808 = vmatpush1.bf16.msra.mxu0 %v9729
  %13809 = vmatprep.subr.bf16.mxu0 0
  %13810 = vmatpush1.bf16.msra.mxu0 %v9730
  %13811 = vmatprep.subr.bf16.mxu0 0
  %13812 = vmatpush1.bf16.msra.mxu0 %v9731
  %13813 = vmatprep.subr.bf16.mxu0 0
  %13814 = vmatpush1.bf16.msra.mxu0 %v9732
  %13815 = vmatprep.subr.bf16.mxu0 0
  %13816 = vmatpush1.bf16.msra.mxu0 %v9733
  %13817 = vmatprep.subr.bf16.mxu0 0
  %13818 = vmatpush1.bf16.msra.mxu0 %v9734
  %13819 = vmatprep.subr.bf16.mxu0 0
  %13820 = vmatpush1.bf16.msra.mxu0 %v9735
  %13821 = vmatprep.subr.bf16.mxu0 0
  %13822 = vmatpush1.bf16.msra.mxu0 %v9736
  %13823 = vmatprep.subr.bf16.mxu0 0
  %13824 = vmatpush1.bf16.msra.mxu0 %v9737
  %13825 = vmatprep.subr.bf16.mxu0 0
  %13826 = vmatpush1.bf16.msra.mxu0 %v9738
  %13827 = vmatprep.mubr.bf16.mxu0 %v3180
  %13828 = vmatmul.mubr.bf16.gmra.mrb[0].mxu0 %v3179
  %v13829 = vpop.f32.mrb[0].mxu0
  %v13830 = vadd.f32 %v13790, %v13829
  %v13831 = vpop.f32.mrb[0].mxu0
  %v13832 = vpop.f32.mrb[0].mxu0
  %v13833 = vpop.f32.mrb[0].mxu0
  %13834 = vdwg.mxu0
  %13835 = vmatprep.subr.bf16.mxu0 0
  %13836 = vmatpush1.bf16.msra.mxu0 %v9739
  %13837 = vmatprep.subr.bf16.mxu0 0
  %13838 = vmatpush1.bf16.msra.mxu0 %v9740
  %13839 = vmatprep.subr.bf16.mxu0 0
  %13840 = vmatpush1.bf16.msra.mxu0 %v9741
  %13841 = vmatprep.subr.bf16.mxu0 0
  %13842 = vmatpush1.bf16.msra.mxu0 %v9742
  %13843 = vmatprep.subr.bf16.mxu0 0
  %13844 = vmatpush1.bf16.msra.mxu0 %v9743
  %13845 = vmatprep.subr.bf16.mxu0 0
  %13846 = vmatpush1.bf16.msra.mxu0 %v9744
  %13847 = vmatprep.subr.bf16.mxu0 0
  %13848 = vmatpush1.bf16.msra.mxu0 %v9745
  %13849 = vmatprep.subr.bf16.mxu0 0
  %13850 = vmatpush1.bf16.msra.mxu0 %v9746
  %13851 = vmatprep.subr.bf16.mxu0 0
  %13852 = vmatpush1.bf16.msra.mxu0 %v9747
  %13853 = vmatprep.subr.bf16.mxu0 0
  %13854 = vmatpush1.bf16.msra.mxu0 %v9748
  %13855 = vmatprep.subr.bf16.mxu0 0
  %13856 = vmatpush1.bf16.msra.mxu0 %v9749
  %13857 = vmatprep.subr.bf16.mxu0 0
  %13858 = vmatpush1.bf16.msra.mxu0 %v9750
  %13859 = vmatprep.subr.bf16.mxu0 0
  %13860 = vmatpush1.bf16.msra.mxu0 %v9751
  %13861 = vmatprep.subr.bf16.mxu0 0
  %13862 = vmatpush1.bf16.msra.mxu0 %v9752
  %13863 = vmatprep.subr.bf16.mxu0 0
  %13864 = vmatpush1.bf16.msra.mxu0 %v9753
  %13865 = vmatprep.subr.bf16.mxu0 0
  %13866 = vmatpush1.bf16.msra.mxu0 %v9754
  %13867 = vmatprep.mubr.bf16.mxu0 %v3182
  %13868 = vmatmul.mubr.bf16.gmra.mrb[0].mxu0 %v3181
  %v13869 = vpop.f32.mrb[0].mxu0
  %v13870 = vadd.f32 %v13830, %v13869
  %v13871 = vpop.f32.mrb[0].mxu0
  %v13872 = vpop.f32.mrb[0].mxu0
  %v13873 = vpop.f32.mrb[0].mxu0
  %13874 = vdwg.mxu0
  %13875 = vmatprep.subr.bf16.mxu0 0
  %13876 = vmatpush1.bf16.msra.mxu0 %v9755
  %13877 = vmatprep.subr.bf16.mxu0 0
  %13878 = vmatpush1.bf16.msra.mxu0 %v9756
  %13879 = vmatprep.subr.bf16.mxu0 0
  %13880 = vmatpush1.bf16.msra.mxu0 %v9757
  %13881 = vmatprep.subr.bf16.mxu0 0
  %13882 = vmatpush1.bf16.msra.mxu0 %v9758
  %13883 = vmatprep.subr.bf16.mxu0 0
  %13884 = vmatpush1.bf16.msra.mxu0 %v9759
  %13885 = vmatprep.subr.bf16.mxu0 0
  %13886 = vmatpush1.bf16.msra.mxu0 %v9760
  %13887 = vmatprep.subr.bf16.mxu0 0
  %13888 = vmatpush1.bf16.msra.mxu0 %v9761
  %13889 = vmatprep.subr.bf16.mxu0 0
  %13890 = vmatpush1.bf16.msra.mxu0 %v9762
  %13891 = vmatprep.subr.bf16.mxu0 0
  %13892 = vmatpush1.bf16.msra.mxu0 %v9763
  %13893 = vmatprep.subr.bf16.mxu0 0
  %13894 = vmatpush1.bf16.msra.mxu0 %v9764
  %13895 = vmatprep.subr.bf16.mxu0 0
  %13896 = vmatpush1.bf16.msra.mxu0 %v9765
  %13897 = vmatprep.subr.bf16.mxu0 0
  %13898 = vmatpush1.bf16.msra.mxu0 %v9766
  %13899 = vmatprep.subr.bf16.mxu0 0
  %13900 = vmatpush1.bf16.msra.mxu0 %v9767
  %13901 = vmatprep.subr.bf16.mxu0 0
  %13902 = vmatpush1.bf16.msra.mxu0 %v9768
  %13903 = vmatprep.subr.bf16.mxu0 0
  %13904 = vmatpush1.bf16.msra.mxu0 %v9769
  %13905 = vmatprep.subr.bf16.mxu0 0
  %13906 = vmatpush1.bf16.msra.mxu0 %v9770
  %13907 = vmatprep.mubr.bf16.mxu0 %v3184
  %13908 = vmatmul.mubr.bf16.gmra.mrb[0].mxu0 %v3183
  %v13909 = vpop.f32.mrb[0].mxu0
  %v13910 = vadd.f32 %v13870, %v13909
  %v13911 = vpop.f32.mrb[0].mxu0
  %v13912 = vpop.f32.mrb[0].mxu0
  %v13913 = vpop.f32.mrb[0].mxu0
  %13914 = vdwg.mxu0
  %13915 = vmatprep.subr.bf16.mxu0 0
  %13916 = vmatpush1.bf16.msra.mxu0 %v9771
  %13917 = vmatprep.subr.bf16.mxu0 0
  %13918 = vmatpush1.bf16.msra.mxu0 %v9772
  %13919 = vmatprep.subr.bf16.mxu0 0
  %13920 = vmatpush1.bf16.msra.mxu0 %v9773
  %13921 = vmatprep.subr.bf16.mxu0 0
  %13922 = vmatpush1.bf16.msra.mxu0 %v9774
  %13923 = vmatprep.subr.bf16.mxu0 0
  %13924 = vmatpush1.bf16.msra.mxu0 %v9775
  %13925 = vmatprep.subr.bf16.mxu0 0
  %13926 = vmatpush1.bf16.msra.mxu0 %v9776
  %13927 = vmatprep.subr.bf16.mxu0 0
  %13928 = vmatpush1.bf16.msra.mxu0 %v9777
  %13929 = vmatprep.subr.bf16.mxu0 0
  %13930 = vmatpush1.bf16.msra.mxu0 %v9778
  %13931 = vmatprep.subr.bf16.mxu0 0
  %13932 = vmatpush1.bf16.msra.mxu0 %v9779
  %13933 = vmatprep.subr.bf16.mxu0 0
  %13934 = vmatpush1.bf16.msra.mxu0 %v9780
  %13935 = vmatprep.subr.bf16.mxu0 0
  %13936 = vmatpush1.bf16.msra.mxu0 %v9781
  %13937 = vmatprep.subr.bf16.mxu0 0
  %13938 = vmatpush1.bf16.msra.mxu0 %v9782
  %13939 = vmatprep.subr.bf16.mxu0 0
  %13940 = vmatpush1.bf16.msra.mxu0 %v9783
  %13941 = vmatprep.subr.bf16.mxu0 0
  %13942 = vmatpush1.bf16.msra.mxu0 %v9784
  %13943 = vmatprep.subr.bf16.mxu0 0
  %13944 = vmatpush1.bf16.msra.mxu0 %v9785
  %13945 = vmatprep.subr.bf16.mxu0 0
  %13946 = vmatpush1.bf16.msra.mxu0 %v9786
  %13947 = vmatprep.mubr.bf16.mxu0 %v3186
  %13948 = vmatmul.mubr.bf16.gmra.mrb[0].mxu0 %v3185
  %v13949 = vpop.f32.mrb[0].mxu0
  %v13950 = vadd.f32 %v13910, %v13949
  %v13951 = vpop.f32.mrb[0].mxu0
  %v13952 = vpop.f32.mrb[0].mxu0
  %v13953 = vpop.f32.mrb[0].mxu0
  %13954 = vdwg.mxu0
  %13955 = vmatprep.subr.bf16.mxu0 0
  %13956 = vmatpush1.bf16.msra.mxu0 %v9787
  %13957 = vmatprep.subr.bf16.mxu0 0
  %13958 = vmatpush1.bf16.msra.mxu0 %v9788
  %13959 = vmatprep.subr.bf16.mxu0 0
  %13960 = vmatpush1.bf16.msra.mxu0 %v9789
  %13961 = vmatprep.subr.bf16.mxu0 0
  %13962 = vmatpush1.bf16.msra.mxu0 %v9790
  %13963 = vmatprep.subr.bf16.mxu0 0
  %13964 = vmatpush1.bf16.msra.mxu0 %v9791
  %13965 = vmatprep.subr.bf16.mxu0 0
  %13966 = vmatpush1.bf16.msra.mxu0 %v9792
  %13967 = vmatprep.subr.bf16.mxu0 0
  %13968 = vmatpush1.bf16.msra.mxu0 %v9793
  %13969 = vmatprep.subr.bf16.mxu0 0
  %13970 = vmatpush1.bf16.msra.mxu0 %v9794
  %13971 = vmatprep.subr.bf16.mxu0 0
  %13972 = vmatpush1.bf16.msra.mxu0 %v9795
  %13973 = vmatprep.subr.bf16.mxu0 0
  %13974 = vmatpush1.bf16.msra.mxu0 %v9796
  %13975 = vmatprep.subr.bf16.mxu0 0
  %13976 = vmatpush1.bf16.msra.mxu0 %v9797
  %13977 = vmatprep.subr.bf16.mxu0 0
  %13978 = vmatpush1.bf16.msra.mxu0 %v9798
  %13979 = vmatprep.subr.bf16.mxu0 0
  %13980 = vmatpush1.bf16.msra.mxu0 %v9799
  %13981 = vmatprep.subr.bf16.mxu0 0
  %13982 = vmatpush1.bf16.msra.mxu0 %v9800
  %13983 = vmatprep.subr.bf16.mxu0 0
  %13984 = vmatpush1.bf16.msra.mxu0 %v9801
  %13985 = vmatprep.subr.bf16.mxu0 0
  %13986 = vmatpush1.bf16.msra.mxu0 %v9802
  %13987 = vmatprep.mubr.bf16.mxu0 %v3188
  %13988 = vmatmul.mubr.bf16.gmra.mrb[0].mxu0 %v3187
  %v13989 = vpop.f32.mrb[0].mxu0
  %v13990 = vadd.f32 %v13950, %v13989
  %v13991 = vpop.f32.mrb[0].mxu0
  %v13992 = vpop.f32.mrb[0].mxu0
  %v13993 = vpop.f32.mrb[0].mxu0
  %13994 = vdwg.mxu0
  %13995 = vmatprep.subr.bf16.mxu0 0
  %13996 = vmatpush1.bf16.msra.mxu0 %v9803
  %13997 = vmatprep.subr.bf16.mxu0 0
  %13998 = vmatpush1.bf16.msra.mxu0 %v9804
  %13999 = vmatprep.subr.bf16.mxu0 0
  %14000 = vmatpush1.bf16.msra.mxu0 %v9805
  %14001 = vmatprep.subr.bf16.mxu0 0
  %14002 = vmatpush1.bf16.msra.mxu0 %v9806
  %14003 = vmatprep.subr.bf16.mxu0 0
  %14004 = vmatpush1.bf16.msra.mxu0 %v9807
  %14005 = vmatprep.subr.bf16.mxu0 0
  %14006 = vmatpush1.bf16.msra.mxu0 %v9808
  %14007 = vmatprep.subr.bf16.mxu0 0
  %14008 = vmatpush1.bf16.msra.mxu0 %v9809
  %14009 = vmatprep.subr.bf16.mxu0 0
  %14010 = vmatpush1.bf16.msra.mxu0 %v9810
  %14011 = vmatprep.subr.bf16.mxu0 0
  %14012 = vmatpush1.bf16.msra.mxu0 %v9811
  %14013 = vmatprep.subr.bf16.mxu0 0
  %14014 = vmatpush1.bf16.msra.mxu0 %v9812
  %14015 = vmatprep.subr.bf16.mxu0 0
  %14016 = vmatpush1.bf16.msra.mxu0 %v9813
  %14017 = vmatprep.subr.bf16.mxu0 0
  %14018 = vmatpush1.bf16.msra.mxu0 %v9814
  %14019 = vmatprep.subr.bf16.mxu0 0
  %14020 = vmatpush1.bf16.msra.mxu0 %v9815
  %14021 = vmatprep.subr.bf16.mxu0 0
  %14022 = vmatpush1.bf16.msra.mxu0 %v9816
  %14023 = vmatprep.subr.bf16.mxu0 0
  %14024 = vmatpush1.bf16.msra.mxu0 %v9817
  %14025 = vmatprep.subr.bf16.mxu0 0
  %14026 = vmatpush1.bf16.msra.mxu0 %v9818
  %14027 = vmatprep.mubr.bf16.mxu0 %v3190
  %14028 = vmatmul.mubr.bf16.gmra.mrb[0].mxu0 %v3189
  %v14029 = vpop.f32.mrb[0].mxu0
  %v14030 = vadd.f32 %v13990, %v14029
  %v14031 = vpop.f32.mrb[0].mxu0
  %v14032 = vpop.f32.mrb[0].mxu0
  %v14033 = vpop.f32.mrb[0].mxu0
  %14034 = vdwg.mxu0
  %14035 = vmatprep.subr.bf16.mxu0 0
  %14036 = vmatpush1.bf16.msra.mxu0 %v9819
  %14037 = vmatprep.subr.bf16.mxu0 0
  %14038 = vmatpush1.bf16.msra.mxu0 %v9820
  %14039 = vmatprep.subr.bf16.mxu0 0
  %14040 = vmatpush1.bf16.msra.mxu0 %v9821
  %14041 = vmatprep.subr.bf16.mxu0 0
  %14042 = vmatpush1.bf16.msra.mxu0 %v9822
  %14043 = vmatprep.subr.bf16.mxu0 0
  %14044 = vmatpush1.bf16.msra.mxu0 %v9823
  %14045 = vmatprep.subr.bf16.mxu0 0
  %14046 = vmatpush1.bf16.msra.mxu0 %v9824
  %14047 = vmatprep.subr.bf16.mxu0 0
  %14048 = vmatpush1.bf16.msra.mxu0 %v9825
  %14049 = vmatprep.subr.bf16.mxu0 0
  %14050 = vmatpush1.bf16.msra.mxu0 %v9826
  %14051 = vmatprep.subr.bf16.mxu0 0
  %14052 = vmatpush1.bf16.msra.mxu0 %v9827
  %14053 = vmatprep.subr.bf16.mxu0 0
  %14054 = vmatpush1.bf16.msra.mxu0 %v9828
  %14055 = vmatprep.subr.bf16.mxu0 0
  %14056 = vmatpush1.bf16.msra.mxu0 %v9829
  %14057 = vmatprep.subr.bf16.mxu0 0
  %14058 = vmatpush1.bf16.msra.mxu0 %v9830
  %14059 = vmatprep.subr.bf16.mxu0 0
  %14060 = vmatpush1.bf16.msra.mxu0 %v9831
  %14061 = vmatprep.subr.bf16.mxu0 0
  %14062 = vmatpush1.bf16.msra.mxu0 %v9832
  %14063 = vmatprep.subr.bf16.mxu0 0
  %14064 = vmatpush1.bf16.msra.mxu0 %v9833
  %14065 = vmatprep.subr.bf16.mxu0 0
  %14066 = vmatpush1.bf16.msra.mxu0 %v9834
  %14067 = vmatprep.mubr.bf16.mxu0 %v3192
  %14068 = vmatmul.mubr.bf16.gmra.mrb[0].mxu0 %v3191
  %v14069 = vpop.f32.mrb[0].mxu0
  %v14070 = vadd.f32 %v14030, %v14069
  %v14071 = vpop.f32.mrb[0].mxu0
  %v14072 = vpop.f32.mrb[0].mxu0
  %v14073 = vpop.f32.mrb[0].mxu0
  %14074 = vdwg.mxu0
  %14075 = vmatprep.subr.bf16.mxu0 0
  %14076 = vmatpush1.bf16.msra.mxu0 %v9835
  %14077 = vmatprep.subr.bf16.mxu0 0
  %14078 = vmatpush1.bf16.msra.mxu0 %v9836
  %14079 = vmatprep.subr.bf16.mxu0 0
  %14080 = vmatpush1.bf16.msra.mxu0 %v9837
  %14081 = vmatprep.subr.bf16.mxu0 0
  %14082 = vmatpush1.bf16.msra.mxu0 %v9838
  %14083 = vmatprep.subr.bf16.mxu0 0
  %14084 = vmatpush1.bf16.msra.mxu0 %v9839
  %14085 = vmatprep.subr.bf16.mxu0 0
  %14086 = vmatpush1.bf16.msra.mxu0 %v9840
  %14087 = vmatprep.subr.bf16.mxu0 0
  %14088 = vmatpush1.bf16.msra.mxu0 %v9841
  %14089 = vmatprep.subr.bf16.mxu0 0
  %14090 = vmatpush1.bf16.msra.mxu0 %v9842
  %14091 = vmatprep.subr.bf16.mxu0 0
  %14092 = vmatpush1.bf16.msra.mxu0 %v9843
  %14093 = vmatprep.subr.bf16.mxu0 0
  %14094 = vmatpush1.bf16.msra.mxu0 %v9844
  %14095 = vmatprep.subr.bf16.mxu0 0
  %14096 = vmatpush1.bf16.msra.mxu0 %v9845
  %14097 = vmatprep.subr.bf16.mxu0 0
  %14098 = vmatpush1.bf16.msra.mxu0 %v9846
  %14099 = vmatprep.subr.bf16.mxu0 0
  %14100 = vmatpush1.bf16.msra.mxu0 %v9847
  %14101 = vmatprep.subr.bf16.mxu0 0
  %14102 = vmatpush1.bf16.msra.mxu0 %v9848
  %14103 = vmatprep.subr.bf16.mxu0 0
  %14104 = vmatpush1.bf16.msra.mxu0 %v9849
  %14105 = vmatprep.subr.bf16.mxu0 0
  %14106 = vmatpush1.bf16.msra.mxu0 %v9850
  %14107 = vmatprep.mubr.bf16.mxu0 %v3194
  %14108 = vmatmul.mubr.bf16.gmra.mrb[0].mxu0 %v3193
  %v14109 = vpop.f32.mrb[0].mxu0
  %v14110 = vadd.f32 %v14070, %v14109
  %v14111 = vpop.f32.mrb[0].mxu0
  %v14112 = vpop.f32.mrb[0].mxu0
  %v14113 = vpop.f32.mrb[0].mxu0
  %14114 = vdwg.mxu0
  %14115 = vmatprep.subr.bf16.mxu0 0
  %14116 = vmatpush1.bf16.msra.mxu0 %v9851
  %14117 = vmatprep.subr.bf16.mxu0 0
  %14118 = vmatpush1.bf16.msra.mxu0 %v9852
  %14119 = vmatprep.subr.bf16.mxu0 0
  %14120 = vmatpush1.bf16.msra.mxu0 %v9853
  %14121 = vmatprep.subr.bf16.mxu0 0
  %14122 = vmatpush1.bf16.msra.mxu0 %v9854
  %14123 = vmatprep.subr.bf16.mxu0 0
  %14124 = vmatpush1.bf16.msra.mxu0 %v9855
  %14125 = vmatprep.subr.bf16.mxu0 0
  %14126 = vmatpush1.bf16.msra.mxu0 %v9856
  %14127 = vmatprep.subr.bf16.mxu0 0
  %14128 = vmatpush1.bf16.msra.mxu0 %v9857
  %14129 = vmatprep.subr.bf16.mxu0 0
  %14130 = vmatpush1.bf16.msra.mxu0 %v9858
  %14131 = vmatprep.subr.bf16.mxu0 0
  %14132 = vmatpush1.bf16.msra.mxu0 %v9859
  %14133 = vmatprep.subr.bf16.mxu0 0
  %14134 = vmatpush1.bf16.msra.mxu0 %v9860
  %14135 = vmatprep.subr.bf16.mxu0 0
  %14136 = vmatpush1.bf16.msra.mxu0 %v9861
  %14137 = vmatprep.subr.bf16.mxu0 0
  %14138 = vmatpush1.bf16.msra.mxu0 %v9862
  %14139 = vmatprep.subr.bf16.mxu0 0
  %14140 = vmatpush1.bf16.msra.mxu0 %v9863
  %14141 = vmatprep.subr.bf16.mxu0 0
  %14142 = vmatpush1.bf16.msra.mxu0 %v9864
  %14143 = vmatprep.subr.bf16.mxu0 0
  %14144 = vmatpush1.bf16.msra.mxu0 %v9865
  %14145 = vmatprep.subr.bf16.mxu0 0
  %14146 = vmatpush1.bf16.msra.mxu0 %v9866
  %14147 = vmatprep.mubr.bf16.mxu0 %v3196
  %14148 = vmatmul.mubr.bf16.gmra.mrb[0].mxu0 %v3195
  %v14149 = vpop.f32.mrb[0].mxu0
  %v14150 = vadd.f32 %v14110, %v14149
  %v14151 = vpop.f32.mrb[0].mxu0
  %v14152 = vpop.f32.mrb[0].mxu0
  %v14153 = vpop.f32.mrb[0].mxu0
  %14154 = vdwg.mxu0
  %14155 = vmatprep.subr.bf16.mxu0 0
  %14156 = vmatpush1.bf16.msra.mxu0 %v9867
  %14157 = vmatprep.subr.bf16.mxu0 0
  %14158 = vmatpush1.bf16.msra.mxu0 %v9868
  %14159 = vmatprep.subr.bf16.mxu0 0
  %14160 = vmatpush1.bf16.msra.mxu0 %v9869
  %14161 = vmatprep.subr.bf16.mxu0 0
  %14162 = vmatpush1.bf16.msra.mxu0 %v9870
  %14163 = vmatprep.subr.bf16.mxu0 0
  %14164 = vmatpush1.bf16.msra.mxu0 %v9871
  %14165 = vmatprep.subr.bf16.mxu0 0
  %14166 = vmatpush1.bf16.msra.mxu0 %v9872
  %14167 = vmatprep.subr.bf16.mxu0 0
  %14168 = vmatpush1.bf16.msra.mxu0 %v9873
  %14169 = vmatprep.subr.bf16.mxu0 0
  %14170 = vmatpush1.bf16.msra.mxu0 %v9874
  %14171 = vmatprep.subr.bf16.mxu0 0
  %14172 = vmatpush1.bf16.msra.mxu0 %v9875
  %14173 = vmatprep.subr.bf16.mxu0 0
  %14174 = vmatpush1.bf16.msra.mxu0 %v9876
  %14175 = vmatprep.subr.bf16.mxu0 0
  %14176 = vmatpush1.bf16.msra.mxu0 %v9877
  %14177 = vmatprep.subr.bf16.mxu0 0
  %14178 = vmatpush1.bf16.msra.mxu0 %v9878
  %14179 = vmatprep.subr.bf16.mxu0 0
  %14180 = vmatpush1.bf16.msra.mxu0 %v9879
  %14181 = vmatprep.subr.bf16.mxu0 0
  %14182 = vmatpush1.bf16.msra.mxu0 %v9880
  %14183 = vmatprep.subr.bf16.mxu0 0
  %14184 = vmatpush1.bf16.msra.mxu0 %v9881
  %14185 = vmatprep.subr.bf16.mxu0 0
  %14186 = vmatpush1.bf16.msra.mxu0 %v9882
  %14187 = vmatprep.mubr.bf16.mxu0 %v3198
  %14188 = vmatmul.mubr.bf16.gmra.mrb[0].mxu0 %v3197
  %v14189 = vpop.f32.mrb[0].mxu0
  %v14190 = vadd.f32 %v14150, %v14189
  %v14191 = vpop.f32.mrb[0].mxu0
  %v14192 = vpop.f32.mrb[0].mxu0
  %v14193 = vpop.f32.mrb[0].mxu0
  %14194 = vdwg.mxu0
  %14195 = vmatprep.subr.bf16.mxu0 0
  %14196 = vmatpush1.bf16.msra.mxu0 %v9883
  %14197 = vmatprep.subr.bf16.mxu0 0
  %14198 = vmatpush1.bf16.msra.mxu0 %v9884
  %14199 = vmatprep.subr.bf16.mxu0 0
  %14200 = vmatpush1.bf16.msra.mxu0 %v9885
  %14201 = vmatprep.subr.bf16.mxu0 0
  %14202 = vmatpush1.bf16.msra.mxu0 %v9886
  %14203 = vmatprep.subr.bf16.mxu0 0
  %14204 = vmatpush1.bf16.msra.mxu0 %v9887
  %14205 = vmatprep.subr.bf16.mxu0 0
  %14206 = vmatpush1.bf16.msra.mxu0 %v9888
  %14207 = vmatprep.subr.bf16.mxu0 0
  %14208 = vmatpush1.bf16.msra.mxu0 %v9889
  %14209 = vmatprep.subr.bf16.mxu0 0
  %14210 = vmatpush1.bf16.msra.mxu0 %v9890
  %14211 = vmatprep.subr.bf16.mxu0 0
  %14212 = vmatpush1.bf16.msra.mxu0 %v9891
  %14213 = vmatprep.subr.bf16.mxu0 0
  %14214 = vmatpush1.bf16.msra.mxu0 %v9892
  %14215 = vmatprep.subr.bf16.mxu0 0
  %14216 = vmatpush1.bf16.msra.mxu0 %v9893
  %14217 = vmatprep.subr.bf16.mxu0 0
  %14218 = vmatpush1.bf16.msra.mxu0 %v9894
  %14219 = vmatprep.subr.bf16.mxu0 0
  %14220 = vmatpush1.bf16.msra.mxu0 %v9895
  %14221 = vmatprep.subr.bf16.mxu0 0
  %14222 = vmatpush1.bf16.msra.mxu0 %v9896
  %14223 = vmatprep.subr.bf16.mxu0 0
  %14224 = vmatpush1.bf16.msra.mxu0 %v9897
  %14225 = vmatprep.subr.bf16.mxu0 0
  %14226 = vmatpush1.bf16.msra.mxu0 %v9898
  %14227 = vmatprep.mubr.bf16.mxu0 %v3200
  %14228 = vmatmul.mubr.bf16.gmra.mrb[0].mxu0 %v3199
  %v14229 = vpop.f32.mrb[0].mxu0
  %v14230 = vadd.f32 %v14190, %v14229
  %v14231 = vpop.f32.mrb[0].mxu0
  %v14232 = vpop.f32.mrb[0].mxu0
  %v14233 = vpop.f32.mrb[0].mxu0
  %14234 = vdwg.mxu0
  %14235 = vmatprep.subr.bf16.mxu0 0
  %14236 = vmatpush1.bf16.msra.mxu0 %v9899
  %14237 = vmatprep.subr.bf16.mxu0 0
  %14238 = vmatpush1.bf16.msra.mxu0 %v9900
  %14239 = vmatprep.subr.bf16.mxu0 0
  %14240 = vmatpush1.bf16.msra.mxu0 %v9901
  %14241 = vmatprep.subr.bf16.mxu0 0
  %14242 = vmatpush1.bf16.msra.mxu0 %v9902
  %14243 = vmatprep.subr.bf16.mxu0 0
  %14244 = vmatpush1.bf16.msra.mxu0 %v9903
  %14245 = vmatprep.subr.bf16.mxu0 0
  %14246 = vmatpush1.bf16.msra.mxu0 %v9904
  %14247 = vmatprep.subr.bf16.mxu0 0
  %14248 = vmatpush1.bf16.msra.mxu0 %v9905
  %14249 = vmatprep.subr.bf16.mxu0 0
  %14250 = vmatpush1.bf16.msra.mxu0 %v9906
  %14251 = vmatprep.subr.bf16.mxu0 0
  %14252 = vmatpush1.bf16.msra.mxu0 %v9907
  %14253 = vmatprep.subr.bf16.mxu0 0
  %14254 = vmatpush1.bf16.msra.mxu0 %v9908
  %14255 = vmatprep.subr.bf16.mxu0 0
  %14256 = vmatpush1.bf16.msra.mxu0 %v9909
  %14257 = vmatprep.subr.bf16.mxu0 0
  %14258 = vmatpush1.bf16.msra.mxu0 %v9910
  %14259 = vmatprep.subr.bf16.mxu0 0
  %14260 = vmatpush1.bf16.msra.mxu0 %v9911
  %14261 = vmatprep.subr.bf16.mxu0 0
  %14262 = vmatpush1.bf16.msra.mxu0 %v9912
  %14263 = vmatprep.subr.bf16.mxu0 0
  %14264 = vmatpush1.bf16.msra.mxu0 %v9913
  %14265 = vmatprep.subr.bf16.mxu0 0
  %14266 = vmatpush1.bf16.msra.mxu0 %v9914
  %14267 = vmatprep.mubr.bf16.mxu0 %v3202
  %14268 = vmatmul.mubr.bf16.gmra.mrb[0].mxu0 %v3201
  %v14269 = vpop.f32.mrb[0].mxu0
  %v14270 = vadd.f32 %v14230, %v14269
  %v14271 = vpop.f32.mrb[0].mxu0
  %v14272 = vpop.f32.mrb[0].mxu0
  %v14273 = vpop.f32.mrb[0].mxu0
  %14274 = vdwg.mxu0
  %14275 = vmatprep.subr.bf16.mxu0 0
  %14276 = vmatpush1.bf16.msra.mxu0 %v9915
  %14277 = vmatprep.subr.bf16.mxu0 0
  %14278 = vmatpush1.bf16.msra.mxu0 %v9916
  %14279 = vmatprep.subr.bf16.mxu0 0
  %14280 = vmatpush1.bf16.msra.mxu0 %v9917
  %14281 = vmatprep.subr.bf16.mxu0 0
  %14282 = vmatpush1.bf16.msra.mxu0 %v9918
  %14283 = vmatprep.subr.bf16.mxu0 0
  %14284 = vmatpush1.bf16.msra.mxu0 %v9919
  %14285 = vmatprep.subr.bf16.mxu0 0
  %14286 = vmatpush1.bf16.msra.mxu0 %v9920
  %14287 = vmatprep.subr.bf16.mxu0 0
  %14288 = vmatpush1.bf16.msra.mxu0 %v9921
  %14289 = vmatprep.subr.bf16.mxu0 0
  %14290 = vmatpush1.bf16.msra.mxu0 %v9922
  %14291 = vmatprep.subr.bf16.mxu0 0
  %14292 = vmatpush1.bf16.msra.mxu0 %v9923
  %14293 = vmatprep.subr.bf16.mxu0 0
  %14294 = vmatpush1.bf16.msra.mxu0 %v9924
  %14295 = vmatprep.subr.bf16.mxu0 0
  %14296 = vmatpush1.bf16.msra.mxu0 %v9925
  %14297 = vmatprep.subr.bf16.mxu0 0
  %14298 = vmatpush1.bf16.msra.mxu0 %v9926
  %14299 = vmatprep.subr.bf16.mxu0 0
  %14300 = vmatpush1.bf16.msra.mxu0 %v9927
  %14301 = vmatprep.subr.bf16.mxu0 0
  %14302 = vmatpush1.bf16.msra.mxu0 %v9928
  %14303 = vmatprep.subr.bf16.mxu0 0
  %14304 = vmatpush1.bf16.msra.mxu0 %v9929
  %14305 = vmatprep.subr.bf16.mxu0 0
  %14306 = vmatpush1.bf16.msra.mxu0 %v9930
  %14307 = vmatprep.mubr.bf16.mxu0 %v3204
  %14308 = vmatmul.mubr.bf16.gmra.mrb[0].mxu0 %v3203
  %v14309 = vpop.f32.mrb[0].mxu0
  %v14310 = vadd.f32 %v14270, %v14309
  %v14311 = vpop.f32.mrb[0].mxu0
  %v14312 = vpop.f32.mrb[0].mxu0
  %v14313 = vpop.f32.mrb[0].mxu0
  %14314 = vdwg.mxu0
  %14315 = vmatprep.subr.bf16.mxu0 0
  %14316 = vmatpush1.bf16.msra.mxu0 %v9931
  %14317 = vmatprep.subr.bf16.mxu0 0
  %14318 = vmatpush1.bf16.msra.mxu0 %v9932
  %14319 = vmatprep.subr.bf16.mxu0 0
  %14320 = vmatpush1.bf16.msra.mxu0 %v9933
  %14321 = vmatprep.subr.bf16.mxu0 0
  %14322 = vmatpush1.bf16.msra.mxu0 %v9934
  %14323 = vmatprep.subr.bf16.mxu0 0
  %14324 = vmatpush1.bf16.msra.mxu0 %v9935
  %14325 = vmatprep.subr.bf16.mxu0 0
  %14326 = vmatpush1.bf16.msra.mxu0 %v9936
  %14327 = vmatprep.subr.bf16.mxu0 0
  %14328 = vmatpush1.bf16.msra.mxu0 %v9937
  %14329 = vmatprep.subr.bf16.mxu0 0
  %14330 = vmatpush1.bf16.msra.mxu0 %v9938
  %14331 = vmatprep.subr.bf16.mxu0 0
  %14332 = vmatpush1.bf16.msra.mxu0 %v9939
  %14333 = vmatprep.subr.bf16.mxu0 0
  %14334 = vmatpush1.bf16.msra.mxu0 %v9940
  %14335 = vmatprep.subr.bf16.mxu0 0
  %14336 = vmatpush1.bf16.msra.mxu0 %v9941
  %14337 = vmatprep.subr.bf16.mxu0 0
  %14338 = vmatpush1.bf16.msra.mxu0 %v9942
  %14339 = vmatprep.subr.bf16.mxu0 0
  %14340 = vmatpush1.bf16.msra.mxu0 %v9943
  %14341 = vmatprep.subr.bf16.mxu0 0
  %14342 = vmatpush1.bf16.msra.mxu0 %v9944
  %14343 = vmatprep.subr.bf16.mxu0 0
  %14344 = vmatpush1.bf16.msra.mxu0 %v9945
  %14345 = vmatprep.subr.bf16.mxu0 0
  %14346 = vmatpush1.bf16.msra.mxu0 %v9946
  %14347 = vmatprep.mubr.bf16.mxu0 %v3206
  %14348 = vmatmul.mubr.bf16.gmra.mrb[0].mxu0 %v3205
  %v14349 = vpop.f32.mrb[0].mxu0
  %v14350 = vadd.f32 %v14310, %v14349
  %v14351 = vpop.f32.mrb[0].mxu0
  %v14352 = vpop.f32.mrb[0].mxu0
  %v14353 = vpop.f32.mrb[0].mxu0
  %14354 = vdwg.mxu0
  %14355 = vmatprep.subr.bf16.mxu0 0
  %14356 = vmatpush1.bf16.msra.mxu0 %v9947
  %14357 = vmatprep.subr.bf16.mxu0 0
  %14358 = vmatpush1.bf16.msra.mxu0 %v9948
  %14359 = vmatprep.subr.bf16.mxu0 0
  %14360 = vmatpush1.bf16.msra.mxu0 %v9949
  %14361 = vmatprep.subr.bf16.mxu0 0
  %14362 = vmatpush1.bf16.msra.mxu0 %v9950
  %14363 = vmatprep.subr.bf16.mxu0 0
  %14364 = vmatpush1.bf16.msra.mxu0 %v9951
  %14365 = vmatprep.subr.bf16.mxu0 0
  %14366 = vmatpush1.bf16.msra.mxu0 %v9952
  %14367 = vmatprep.subr.bf16.mxu0 0
  %14368 = vmatpush1.bf16.msra.mxu0 %v9953
  %14369 = vmatprep.subr.bf16.mxu0 0
  %14370 = vmatpush1.bf16.msra.mxu0 %v9954
  %14371 = vmatprep.subr.bf16.mxu0 0
  %14372 = vmatpush1.bf16.msra.mxu0 %v9955
  %14373 = vmatprep.subr.bf16.mxu0 0
  %14374 = vmatpush1.bf16.msra.mxu0 %v9956
  %14375 = vmatprep.subr.bf16.mxu0 0
  %14376 = vmatpush1.bf16.msra.mxu0 %v9957
  %14377 = vmatprep.subr.bf16.mxu0 0
  %14378 = vmatpush1.bf16.msra.mxu0 %v9958
  %14379 = vmatprep.subr.bf16.mxu0 0
  %14380 = vmatpush1.bf16.msra.mxu0 %v9959
  %14381 = vmatprep.subr.bf16.mxu0 0
  %14382 = vmatpush1.bf16.msra.mxu0 %v9960
  %14383 = vmatprep.subr.bf16.mxu0 0
  %14384 = vmatpush1.bf16.msra.mxu0 %v9961
  %14385 = vmatprep.subr.bf16.mxu0 0
  %14386 = vmatpush1.bf16.msra.mxu0 %v9962
  %14387 = vmatprep.mubr.bf16.mxu0 %v3208
  %14388 = vmatmul.mubr.bf16.gmra.mrb[0].mxu0 %v3207
  %v14389 = vpop.f32.mrb[0].mxu0
  %v14390 = vadd.f32 %v14350, %v14389
  %v14391 = vpop.f32.mrb[0].mxu0
  %v14392 = vpop.f32.mrb[0].mxu0
  %v14393 = vpop.f32.mrb[0].mxu0
  %14394 = vdwg.mxu0
  %14395 = vmatprep.subr.bf16.mxu0 0
  %14396 = vmatpush1.bf16.msra.mxu0 %v9963
  %14397 = vmatprep.subr.bf16.mxu0 0
  %14398 = vmatpush1.bf16.msra.mxu0 %v9964
  %14399 = vmatprep.subr.bf16.mxu0 0
  %14400 = vmatpush1.bf16.msra.mxu0 %v9965
  %14401 = vmatprep.subr.bf16.mxu0 0
  %14402 = vmatpush1.bf16.msra.mxu0 %v9966
  %14403 = vmatprep.subr.bf16.mxu0 0
  %14404 = vmatpush1.bf16.msra.mxu0 %v9967
  %14405 = vmatprep.subr.bf16.mxu0 0
  %14406 = vmatpush1.bf16.msra.mxu0 %v9968
  %14407 = vmatprep.subr.bf16.mxu0 0
  %14408 = vmatpush1.bf16.msra.mxu0 %v9969
  %14409 = vmatprep.subr.bf16.mxu0 0
  %14410 = vmatpush1.bf16.msra.mxu0 %v9970
  %14411 = vmatprep.subr.bf16.mxu0 0
  %14412 = vmatpush1.bf16.msra.mxu0 %v9971
  %14413 = vmatprep.subr.bf16.mxu0 0
  %14414 = vmatpush1.bf16.msra.mxu0 %v9972
  %14415 = vmatprep.subr.bf16.mxu0 0
  %14416 = vmatpush1.bf16.msra.mxu0 %v9973
  %14417 = vmatprep.subr.bf16.mxu0 0
  %14418 = vmatpush1.bf16.msra.mxu0 %v9974
  %14419 = vmatprep.subr.bf16.mxu0 0
  %14420 = vmatpush1.bf16.msra.mxu0 %v9975
  %14421 = vmatprep.subr.bf16.mxu0 0
  %14422 = vmatpush1.bf16.msra.mxu0 %v9976
  %14423 = vmatprep.subr.bf16.mxu0 0
  %14424 = vmatpush1.bf16.msra.mxu0 %v9977
  %14425 = vmatprep.subr.bf16.mxu0 0
  %14426 = vmatpush1.bf16.msra.mxu0 %v9978
  %14427 = vmatprep.mubr.bf16.mxu0 %v3210
  %14428 = vmatmul.mubr.bf16.gmra.mrb[0].mxu0 %v3209
  %v14429 = vpop.f32.mrb[0].mxu0
  %v14430 = vadd.f32 %v14390, %v14429
  %v14431 = vpop.f32.mrb[0].mxu0
  %v14432 = vpop.f32.mrb[0].mxu0
  %v14433 = vpop.f32.mrb[0].mxu0
  %14434 = vdwg.mxu0
  %14435 = vmatprep.subr.bf16.mxu0 0
  %14436 = vmatpush1.bf16.msra.mxu0 %v9979
  %14437 = vmatprep.subr.bf16.mxu0 0
  %14438 = vmatpush1.bf16.msra.mxu0 %v9980
  %14439 = vmatprep.subr.bf16.mxu0 0
  %14440 = vmatpush1.bf16.msra.mxu0 %v9981
  %14441 = vmatprep.subr.bf16.mxu0 0
  %14442 = vmatpush1.bf16.msra.mxu0 %v9982
  %14443 = vmatprep.subr.bf16.mxu0 0
  %14444 = vmatpush1.bf16.msra.mxu0 %v9983
  %14445 = vmatprep.subr.bf16.mxu0 0
  %14446 = vmatpush1.bf16.msra.mxu0 %v9984
  %14447 = vmatprep.subr.bf16.mxu0 0
  %14448 = vmatpush1.bf16.msra.mxu0 %v9985
  %14449 = vmatprep.subr.bf16.mxu0 0
  %14450 = vmatpush1.bf16.msra.mxu0 %v9986
  %14451 = vmatprep.subr.bf16.mxu0 0
  %14452 = vmatpush1.bf16.msra.mxu0 %v9987
  %14453 = vmatprep.subr.bf16.mxu0 0
  %14454 = vmatpush1.bf16.msra.mxu0 %v9988
  %14455 = vmatprep.subr.bf16.mxu0 0
  %14456 = vmatpush1.bf16.msra.mxu0 %v9989
  %14457 = vmatprep.subr.bf16.mxu0 0
  %14458 = vmatpush1.bf16.msra.mxu0 %v9990
  %14459 = vmatprep.subr.bf16.mxu0 0
  %14460 = vmatpush1.bf16.msra.mxu0 %v9991
  %14461 = vmatprep.subr.bf16.mxu0 0
  %14462 = vmatpush1.bf16.msra.mxu0 %v9992
  %14463 = vmatprep.subr.bf16.mxu0 0
  %14464 = vmatpush1.bf16.msra.mxu0 %v9993
  %14465 = vmatprep.subr.bf16.mxu0 0
  %14466 = vmatpush1.bf16.msra.mxu0 %v9994
  %14467 = vmatprep.mubr.bf16.mxu0 %v3212
  %14468 = vmatmul.mubr.bf16.gmra.mrb[0].mxu0 %v3211
  %v14469 = vpop.f32.mrb[0].mxu0
  %v14470 = vadd.f32 %v14430, %v14469
  %v14471 = vpop.f32.mrb[0].mxu0
  %v14472 = vpop.f32.mrb[0].mxu0
  %v14473 = vpop.f32.mrb[0].mxu0
  %14474 = vdwg.mxu0
  %14475 = vmatprep.subr.bf16.mxu0 0
  %14476 = vmatpush1.bf16.msra.mxu0 %v9995
  %14477 = vmatprep.subr.bf16.mxu0 0
  %14478 = vmatpush1.bf16.msra.mxu0 %v9996
  %14479 = vmatprep.subr.bf16.mxu0 0
  %14480 = vmatpush1.bf16.msra.mxu0 %v9997
  %14481 = vmatprep.subr.bf16.mxu0 0
  %14482 = vmatpush1.bf16.msra.mxu0 %v9998
  %14483 = vmatprep.subr.bf16.mxu0 0
  %14484 = vmatpush1.bf16.msra.mxu0 %v9999
  %14485 = vmatprep.subr.bf16.mxu0 0
  %14486 = vmatpush1.bf16.msra.mxu0 %v10000
  %14487 = vmatprep.subr.bf16.mxu0 0
  %14488 = vmatpush1.bf16.msra.mxu0 %v10001
  %14489 = vmatprep.subr.bf16.mxu0 0
  %14490 = vmatpush1.bf16.msra.mxu0 %v10002
  %14491 = vmatprep.subr.bf16.mxu0 0
  %14492 = vmatpush1.bf16.msra.mxu0 %v10003
  %14493 = vmatprep.subr.bf16.mxu0 0
  %14494 = vmatpush1.bf16.msra.mxu0 %v10004
  %14495 = vmatprep.subr.bf16.mxu0 0
  %14496 = vmatpush1.bf16.msra.mxu0 %v10005
  %14497 = vmatprep.subr.bf16.mxu0 0
  %14498 = vmatpush1.bf16.msra.mxu0 %v10006
  %14499 = vmatprep.subr.bf16.mxu0 0
  %14500 = vmatpush1.bf16.msra.mxu0 %v10007
  %14501 = vmatprep.subr.bf16.mxu0 0
  %14502 = vmatpush1.bf16.msra.mxu0 %v10008
  %14503 = vmatprep.subr.bf16.mxu0 0
  %14504 = vmatpush1.bf16.msra.mxu0 %v10009
  %14505 = vmatprep.subr.bf16.mxu0 0
  %14506 = vmatpush1.bf16.msra.mxu0 %v10010
  %14507 = vmatprep.mubr.bf16.mxu0 %v3214
  %14508 = vmatmul.mubr.bf16.gmra.mrb[0].mxu0 %v3213
  %v14509 = vpop.f32.mrb[0].mxu0
  %v14510 = vadd.f32 %v14470, %v14509
  %v14511 = vpop.f32.mrb[0].mxu0
  %v14512 = vpop.f32.mrb[0].mxu0
  %v14513 = vpop.f32.mrb[0].mxu0
  %14514 = vdwg.mxu0
  %14515 = vmatprep.subr.bf16.mxu0 0
  %14516 = vmatpush1.bf16.msra.mxu0 %v10011
  %14517 = vmatprep.subr.bf16.mxu0 0
  %14518 = vmatpush1.bf16.msra.mxu0 %v10012
  %14519 = vmatprep.subr.bf16.mxu0 0
  %14520 = vmatpush1.bf16.msra.mxu0 %v10013
  %14521 = vmatprep.subr.bf16.mxu0 0
  %14522 = vmatpush1.bf16.msra.mxu0 %v10014
  %14523 = vmatprep.subr.bf16.mxu0 0
  %14524 = vmatpush1.bf16.msra.mxu0 %v10015
  %14525 = vmatprep.subr.bf16.mxu0 0
  %14526 = vmatpush1.bf16.msra.mxu0 %v10016
  %14527 = vmatprep.subr.bf16.mxu0 0
  %14528 = vmatpush1.bf16.msra.mxu0 %v10017
  %14529 = vmatprep.subr.bf16.mxu0 0
  %14530 = vmatpush1.bf16.msra.mxu0 %v10018
  %14531 = vmatprep.subr.bf16.mxu0 0
  %14532 = vmatpush1.bf16.msra.mxu0 %v10019
  %14533 = vmatprep.subr.bf16.mxu0 0
  %14534 = vmatpush1.bf16.msra.mxu0 %v10020
  %14535 = vmatprep.subr.bf16.mxu0 0
  %14536 = vmatpush1.bf16.msra.mxu0 %v10021
  %14537 = vmatprep.subr.bf16.mxu0 0
  %14538 = vmatpush1.bf16.msra.mxu0 %v10022
  %14539 = vmatprep.subr.bf16.mxu0 0
  %14540 = vmatpush1.bf16.msra.mxu0 %v10023
  %14541 = vmatprep.subr.bf16.mxu0 0
  %14542 = vmatpush1.bf16.msra.mxu0 %v10024
  %14543 = vmatprep.subr.bf16.mxu0 0
  %14544 = vmatpush1.bf16.msra.mxu0 %v10025
  %14545 = vmatprep.subr.bf16.mxu0 0
  %14546 = vmatpush1.bf16.msra.mxu0 %v10026
  %14547 = vmatprep.mubr.bf16.mxu0 %v3216
  %14548 = vmatmul.mubr.bf16.gmra.mrb[0].mxu0 %v3215
  %v14549 = vpop.f32.mrb[0].mxu0
  %v14550 = vadd.f32 %v14510, %v14549
  %v14551 = vpop.f32.mrb[0].mxu0
  %v14552 = vpop.f32.mrb[0].mxu0
  %v14553 = vpop.f32.mrb[0].mxu0
  %14554 = vdwg.mxu0
  %14555 = vmatprep.subr.bf16.mxu0 0
  %14556 = vmatpush1.bf16.msra.mxu0 %v10027
  %14557 = vmatprep.subr.bf16.mxu0 0
  %14558 = vmatpush1.bf16.msra.mxu0 %v10028
  %14559 = vmatprep.subr.bf16.mxu0 0
  %14560 = vmatpush1.bf16.msra.mxu0 %v10029
  %14561 = vmatprep.subr.bf16.mxu0 0
  %14562 = vmatpush1.bf16.msra.mxu0 %v10030
  %14563 = vmatprep.subr.bf16.mxu0 0
  %14564 = vmatpush1.bf16.msra.mxu0 %v10031
  %14565 = vmatprep.subr.bf16.mxu0 0
  %14566 = vmatpush1.bf16.msra.mxu0 %v10032
  %14567 = vmatprep.subr.bf16.mxu0 0
  %14568 = vmatpush1.bf16.msra.mxu0 %v10033
  %14569 = vmatprep.subr.bf16.mxu0 0
  %14570 = vmatpush1.bf16.msra.mxu0 %v10034
  %14571 = vmatprep.subr.bf16.mxu0 0
  %14572 = vmatpush1.bf16.msra.mxu0 %v10035
  %14573 = vmatprep.subr.bf16.mxu0 0
  %14574 = vmatpush1.bf16.msra.mxu0 %v10036
  %14575 = vmatprep.subr.bf16.mxu0 0
  %14576 = vmatpush1.bf16.msra.mxu0 %v10037
  %14577 = vmatprep.subr.bf16.mxu0 0
  %14578 = vmatpush1.bf16.msra.mxu0 %v10038
  %14579 = vmatprep.subr.bf16.mxu0 0
  %14580 = vmatpush1.bf16.msra.mxu0 %v10039
  %14581 = vmatprep.subr.bf16.mxu0 0
  %14582 = vmatpush1.bf16.msra.mxu0 %v10040
  %14583 = vmatprep.subr.bf16.mxu0 0
  %14584 = vmatpush1.bf16.msra.mxu0 %v10041
  %14585 = vmatprep.subr.bf16.mxu0 0
  %14586 = vmatpush1.bf16.msra.mxu0 %v10042
  %14587 = vmatprep.mubr.bf16.mxu0 %v3218
  %14588 = vmatmul.mubr.bf16.gmra.mrb[0].mxu0 %v3217
  %v14589 = vpop.f32.mrb[0].mxu0
  %v14590 = vadd.f32 %v14550, %v14589
  %v14591 = vpop.f32.mrb[0].mxu0
  %v14592 = vpop.f32.mrb[0].mxu0
  %v14593 = vpop.f32.mrb[0].mxu0
  %14594 = vdwg.mxu0
  %14595 = vmatprep.subr.bf16.mxu0 0
  %14596 = vmatpush1.bf16.msra.mxu0 %v10043
  %14597 = vmatprep.subr.bf16.mxu0 0
  %14598 = vmatpush1.bf16.msra.mxu0 %v10044
  %14599 = vmatprep.subr.bf16.mxu0 0
  %14600 = vmatpush1.bf16.msra.mxu0 %v10045
  %14601 = vmatprep.subr.bf16.mxu0 0
  %14602 = vmatpush1.bf16.msra.mxu0 %v10046
  %14603 = vmatprep.subr.bf16.mxu0 0
  %14604 = vmatpush1.bf16.msra.mxu0 %v10047
  %14605 = vmatprep.subr.bf16.mxu0 0
  %14606 = vmatpush1.bf16.msra.mxu0 %v10048
  %14607 = vmatprep.subr.bf16.mxu0 0
  %14608 = vmatpush1.bf16.msra.mxu0 %v10049
  %14609 = vmatprep.subr.bf16.mxu0 0
  %14610 = vmatpush1.bf16.msra.mxu0 %v10050
  %14611 = vmatprep.subr.bf16.mxu0 0
  %14612 = vmatpush1.bf16.msra.mxu0 %v10051
  %14613 = vmatprep.subr.bf16.mxu0 0
  %14614 = vmatpush1.bf16.msra.mxu0 %v10052
  %14615 = vmatprep.subr.bf16.mxu0 0
  %14616 = vmatpush1.bf16.msra.mxu0 %v10053
  %14617 = vmatprep.subr.bf16.mxu0 0
  %14618 = vmatpush1.bf16.msra.mxu0 %v10054
  %14619 = vmatprep.subr.bf16.mxu0 0
  %14620 = vmatpush1.bf16.msra.mxu0 %v10055
  %14621 = vmatprep.subr.bf16.mxu0 0
  %14622 = vmatpush1.bf16.msra.mxu0 %v10056
  %14623 = vmatprep.subr.bf16.mxu0 0
  %14624 = vmatpush1.bf16.msra.mxu0 %v10057
  %14625 = vmatprep.subr.bf16.mxu0 0
  %14626 = vmatpush1.bf16.msra.mxu0 %v10058
  %14627 = vmatprep.mubr.bf16.mxu0 %v3220
  %14628 = vmatmul.mubr.bf16.gmra.mrb[0].mxu0 %v3219
  %v14629 = vpop.f32.mrb[0].mxu0
  %v14630 = vadd.f32 %v14590, %v14629
  %v14631 = vpop.f32.mrb[0].mxu0
  %v14632 = vpop.f32.mrb[0].mxu0
  %v14633 = vpop.f32.mrb[0].mxu0
  %14634 = vdwg.mxu0
  %14635 = vmatprep.subr.bf16.mxu0 0
  %14636 = vmatpush1.bf16.msra.mxu0 %v10059
  %14637 = vmatprep.subr.bf16.mxu0 0
  %14638 = vmatpush1.bf16.msra.mxu0 %v10060
  %14639 = vmatprep.subr.bf16.mxu0 0
  %14640 = vmatpush1.bf16.msra.mxu0 %v10061
  %14641 = vmatprep.subr.bf16.mxu0 0
  %14642 = vmatpush1.bf16.msra.mxu0 %v10062
  %14643 = vmatprep.subr.bf16.mxu0 0
  %14644 = vmatpush1.bf16.msra.mxu0 %v10063
  %14645 = vmatprep.subr.bf16.mxu0 0
  %14646 = vmatpush1.bf16.msra.mxu0 %v10064
  %14647 = vmatprep.subr.bf16.mxu0 0
  %14648 = vmatpush1.bf16.msra.mxu0 %v10065
  %14649 = vmatprep.subr.bf16.mxu0 0
  %14650 = vmatpush1.bf16.msra.mxu0 %v10066
  %14651 = vmatprep.subr.bf16.mxu0 0
  %14652 = vmatpush1.bf16.msra.mxu0 %v10067
  %14653 = vmatprep.subr.bf16.mxu0 0
  %14654 = vmatpush1.bf16.msra.mxu0 %v10068
  %14655 = vmatprep.subr.bf16.mxu0 0
  %14656 = vmatpush1.bf16.msra.mxu0 %v10069
  %14657 = vmatprep.subr.bf16.mxu0 0
  %14658 = vmatpush1.bf16.msra.mxu0 %v10070
  %14659 = vmatprep.subr.bf16.mxu0 0
  %14660 = vmatpush1.bf16.msra.mxu0 %v10071
  %14661 = vmatprep.subr.bf16.mxu0 0
  %14662 = vmatpush1.bf16.msra.mxu0 %v10072
  %14663 = vmatprep.subr.bf16.mxu0 0
  %14664 = vmatpush1.bf16.msra.mxu0 %v10073
  %14665 = vmatprep.subr.bf16.mxu0 0
  %14666 = vmatpush1.bf16.msra.mxu0 %v10074
  %14667 = vmatprep.mubr.bf16.mxu0 %v3222
  %14668 = vmatmul.mubr.bf16.gmra.mrb[0].mxu0 %v3221
  %v14669 = vpop.f32.mrb[0].mxu0
  %v14670 = vadd.f32 %v14630, %v14669
  %v14671 = vpop.f32.mrb[0].mxu0
  %v14672 = vpop.f32.mrb[0].mxu0
  %v14673 = vpop.f32.mrb[0].mxu0
  %14674 = vdwg.mxu0
  %14675 = vmatprep.subr.bf16.mxu0 0
  %14676 = vmatpush1.bf16.msra.mxu0 %v10075
  %14677 = vmatprep.subr.bf16.mxu0 0
  %14678 = vmatpush1.bf16.msra.mxu0 %v10076
  %14679 = vmatprep.subr.bf16.mxu0 0
  %14680 = vmatpush1.bf16.msra.mxu0 %v10077
  %14681 = vmatprep.subr.bf16.mxu0 0
  %14682 = vmatpush1.bf16.msra.mxu0 %v10078
  %14683 = vmatprep.subr.bf16.mxu0 0
  %14684 = vmatpush1.bf16.msra.mxu0 %v10079
  %14685 = vmatprep.subr.bf16.mxu0 0
  %14686 = vmatpush1.bf16.msra.mxu0 %v10080
  %14687 = vmatprep.subr.bf16.mxu0 0
  %14688 = vmatpush1.bf16.msra.mxu0 %v10081
  %14689 = vmatprep.subr.bf16.mxu0 0
  %14690 = vmatpush1.bf16.msra.mxu0 %v10082
  %14691 = vmatprep.subr.bf16.mxu0 0
  %14692 = vmatpush1.bf16.msra.mxu0 %v10083
  %14693 = vmatprep.subr.bf16.mxu0 0
  %14694 = vmatpush1.bf16.msra.mxu0 %v10084
  %14695 = vmatprep.subr.bf16.mxu0 0
  %14696 = vmatpush1.bf16.msra.mxu0 %v10085
  %14697 = vmatprep.subr.bf16.mxu0 0
  %14698 = vmatpush1.bf16.msra.mxu0 %v10086
  %14699 = vmatprep.subr.bf16.mxu0 0
  %14700 = vmatpush1.bf16.msra.mxu0 %v10087
  %14701 = vmatprep.subr.bf16.mxu0 0
  %14702 = vmatpush1.bf16.msra.mxu0 %v10088
  %14703 = vmatprep.subr.bf16.mxu0 0
  %14704 = vmatpush1.bf16.msra.mxu0 %v10089
  %14705 = vmatprep.subr.bf16.mxu0 0
  %14706 = vmatpush1.bf16.msra.mxu0 %v10090
  %14707 = vmatprep.mubr.bf16.mxu0 %v3224
  %14708 = vmatmul.mubr.bf16.gmra.mrb[0].mxu0 %v3223
  %v14709 = vpop.f32.mrb[0].mxu0
  %v14710 = vadd.f32 %v14670, %v14709
  %v14711 = vpop.f32.mrb[0].mxu0
  %v14712 = vpop.f32.mrb[0].mxu0
  %v14713 = vpop.f32.mrb[0].mxu0
  %14714 = vdwg.mxu0
  %14715 = vmatprep.subr.bf16.mxu0 0
  %14716 = vmatpush1.bf16.msra.mxu0 %v10091
  %14717 = vmatprep.subr.bf16.mxu0 0
  %14718 = vmatpush1.bf16.msra.mxu0 %v10092
  %14719 = vmatprep.subr.bf16.mxu0 0
  %14720 = vmatpush1.bf16.msra.mxu0 %v10093
  %14721 = vmatprep.subr.bf16.mxu0 0
  %14722 = vmatpush1.bf16.msra.mxu0 %v10094
  %14723 = vmatprep.subr.bf16.mxu0 0
  %14724 = vmatpush1.bf16.msra.mxu0 %v10095
  %14725 = vmatprep.subr.bf16.mxu0 0
  %14726 = vmatpush1.bf16.msra.mxu0 %v10096
  %14727 = vmatprep.subr.bf16.mxu0 0
  %14728 = vmatpush1.bf16.msra.mxu0 %v10097
  %14729 = vmatprep.subr.bf16.mxu0 0
  %14730 = vmatpush1.bf16.msra.mxu0 %v10098
  %14731 = vmatprep.subr.bf16.mxu0 0
  %14732 = vmatpush1.bf16.msra.mxu0 %v10099
  %14733 = vmatprep.subr.bf16.mxu0 0
  %14734 = vmatpush1.bf16.msra.mxu0 %v10100
  %14735 = vmatprep.subr.bf16.mxu0 0
  %14736 = vmatpush1.bf16.msra.mxu0 %v10101
  %14737 = vmatprep.subr.bf16.mxu0 0
  %14738 = vmatpush1.bf16.msra.mxu0 %v10102
  %14739 = vmatprep.subr.bf16.mxu0 0
  %14740 = vmatpush1.bf16.msra.mxu0 %v10103
  %14741 = vmatprep.subr.bf16.mxu0 0
  %14742 = vmatpush1.bf16.msra.mxu0 %v10104
  %14743 = vmatprep.subr.bf16.mxu0 0
  %14744 = vmatpush1.bf16.msra.mxu0 %v10105
  %14745 = vmatprep.subr.bf16.mxu0 0
  %14746 = vmatpush1.bf16.msra.mxu0 %v10106
  %14747 = vmatprep.mubr.bf16.mxu0 %v3226
  %14748 = vmatmul.mubr.bf16.gmra.mrb[0].mxu0 %v3225
  %v14749 = vpop.f32.mrb[0].mxu0
  %v14750 = vadd.f32 %v14710, %v14749
  %v14751 = vpop.f32.mrb[0].mxu0
  %v14752 = vpop.f32.mrb[0].mxu0
  %v14753 = vpop.f32.mrb[0].mxu0
  %14754 = vdwg.mxu0
  %14755 = vmatprep.subr.bf16.mxu0 0
  %14756 = vmatpush1.bf16.msra.mxu0 %v10107
  %14757 = vmatprep.subr.bf16.mxu0 0
  %14758 = vmatpush1.bf16.msra.mxu0 %v10108
  %14759 = vmatprep.subr.bf16.mxu0 0
  %14760 = vmatpush1.bf16.msra.mxu0 %v10109
  %14761 = vmatprep.subr.bf16.mxu0 0
  %14762 = vmatpush1.bf16.msra.mxu0 %v10110
  %14763 = vmatprep.subr.bf16.mxu0 0
  %14764 = vmatpush1.bf16.msra.mxu0 %v10111
  %14765 = vmatprep.subr.bf16.mxu0 0
  %14766 = vmatpush1.bf16.msra.mxu0 %v10112
  %14767 = vmatprep.subr.bf16.mxu0 0
  %14768 = vmatpush1.bf16.msra.mxu0 %v10113
  %14769 = vmatprep.subr.bf16.mxu0 0
  %14770 = vmatpush1.bf16.msra.mxu0 %v10114
  %14771 = vmatprep.subr.bf16.mxu0 0
  %14772 = vmatpush1.bf16.msra.mxu0 %v10115
  %14773 = vmatprep.subr.bf16.mxu0 0
  %14774 = vmatpush1.bf16.msra.mxu0 %v10116
  %14775 = vmatprep.subr.bf16.mxu0 0
  %14776 = vmatpush1.bf16.msra.mxu0 %v10117
  %14777 = vmatprep.subr.bf16.mxu0 0
  %14778 = vmatpush1.bf16.msra.mxu0 %v10118
  %14779 = vmatprep.subr.bf16.mxu0 0
  %14780 = vmatpush1.bf16.msra.mxu0 %v10119
  %14781 = vmatprep.subr.bf16.mxu0 0
  %14782 = vmatpush1.bf16.msra.mxu0 %v10120
  %14783 = vmatprep.subr.bf16.mxu0 0
  %14784 = vmatpush1.bf16.msra.mxu0 %v10121
  %14785 = vmatprep.subr.bf16.mxu0 0
  %14786 = vmatpush1.bf16.msra.mxu0 %v10122
  %14787 = vmatprep.mubr.bf16.mxu0 %v3228
  %14788 = vmatmul.mubr.bf16.gmra.mrb[0].mxu0 %v3227
  %v14789 = vpop.f32.mrb[0].mxu0
  %v14790 = vadd.f32 %v14750, %v14789
  %v14791 = vpop.f32.mrb[0].mxu0
  %v14792 = vpop.f32.mrb[0].mxu0
  %v14793 = vpop.f32.mrb[0].mxu0
  %14794 = vdwg.mxu0
  %14795 = vmatprep.subr.bf16.mxu0 0
  %14796 = vmatpush1.bf16.msra.mxu0 %v10123
  %14797 = vmatprep.subr.bf16.mxu0 0
  %14798 = vmatpush1.bf16.msra.mxu0 %v10124
  %14799 = vmatprep.subr.bf16.mxu0 0
  %14800 = vmatpush1.bf16.msra.mxu0 %v10125
  %14801 = vmatprep.subr.bf16.mxu0 0
  %14802 = vmatpush1.bf16.msra.mxu0 %v10126
  %14803 = vmatprep.subr.bf16.mxu0 0
  %14804 = vmatpush1.bf16.msra.mxu0 %v10127
  %14805 = vmatprep.subr.bf16.mxu0 0
  %14806 = vmatpush1.bf16.msra.mxu0 %v10128
  %14807 = vmatprep.subr.bf16.mxu0 0
  %14808 = vmatpush1.bf16.msra.mxu0 %v10129
  %14809 = vmatprep.subr.bf16.mxu0 0
  %14810 = vmatpush1.bf16.msra.mxu0 %v10130
  %14811 = vmatprep.subr.bf16.mxu0 0
  %14812 = vmatpush1.bf16.msra.mxu0 %v10131
  %14813 = vmatprep.subr.bf16.mxu0 0
  %14814 = vmatpush1.bf16.msra.mxu0 %v10132
  %14815 = vmatprep.subr.bf16.mxu0 0
  %14816 = vmatpush1.bf16.msra.mxu0 %v10133
  %14817 = vmatprep.subr.bf16.mxu0 0
  %14818 = vmatpush1.bf16.msra.mxu0 %v10134
  %14819 = vmatprep.subr.bf16.mxu0 0
  %14820 = vmatpush1.bf16.msra.mxu0 %v10135
  %14821 = vmatprep.subr.bf16.mxu0 0
  %14822 = vmatpush1.bf16.msra.mxu0 %v10136
  %14823 = vmatprep.subr.bf16.mxu0 0
  %14824 = vmatpush1.bf16.msra.mxu0 %v10137
  %14825 = vmatprep.subr.bf16.mxu0 0
  %14826 = vmatpush1.bf16.msra.mxu0 %v10138
  %14827 = vmatprep.mubr.bf16.mxu0 %v3230
  %14828 = vmatmul.mubr.bf16.gmra.mrb[0].mxu0 %v3229
  %v14829 = vpop.f32.mrb[0].mxu0
  %v14830 = vadd.f32 %v14790, %v14829
  %v14831 = vpop.f32.mrb[0].mxu0
  %v14832 = vpop.f32.mrb[0].mxu0
  %v14833 = vpop.f32.mrb[0].mxu0
  %14834 = vdwg.mxu0
  %14835 = vmatprep.subr.bf16.mxu0 0
  %14836 = vmatpush1.bf16.msra.mxu0 %v10139
  %14837 = vmatprep.subr.bf16.mxu0 0
  %14838 = vmatpush1.bf16.msra.mxu0 %v10140
  %14839 = vmatprep.subr.bf16.mxu0 0
  %14840 = vmatpush1.bf16.msra.mxu0 %v10141
  %14841 = vmatprep.subr.bf16.mxu0 0
  %14842 = vmatpush1.bf16.msra.mxu0 %v10142
  %14843 = vmatprep.subr.bf16.mxu0 0
  %14844 = vmatpush1.bf16.msra.mxu0 %v10143
  %14845 = vmatprep.subr.bf16.mxu0 0
  %14846 = vmatpush1.bf16.msra.mxu0 %v10144
  %14847 = vmatprep.subr.bf16.mxu0 0
  %14848 = vmatpush1.bf16.msra.mxu0 %v10145
  %14849 = vmatprep.subr.bf16.mxu0 0
  %14850 = vmatpush1.bf16.msra.mxu0 %v10146
  %14851 = vmatprep.subr.bf16.mxu0 0
  %14852 = vmatpush1.bf16.msra.mxu0 %v10147
  %14853 = vmatprep.subr.bf16.mxu0 0
  %14854 = vmatpush1.bf16.msra.mxu0 %v10148
  %14855 = vmatprep.subr.bf16.mxu0 0
  %14856 = vmatpush1.bf16.msra.mxu0 %v10149
  %14857 = vmatprep.subr.bf16.mxu0 0
  %14858 = vmatpush1.bf16.msra.mxu0 %v10150
  %14859 = vmatprep.subr.bf16.mxu0 0
  %14860 = vmatpush1.bf16.msra.mxu0 %v10151
  %14861 = vmatprep.subr.bf16.mxu0 0
  %14862 = vmatpush1.bf16.msra.mxu0 %v10152
  %14863 = vmatprep.subr.bf16.mxu0 0
  %14864 = vmatpush1.bf16.msra.mxu0 %v10153
  %14865 = vmatprep.subr.bf16.mxu0 0
  %14866 = vmatpush1.bf16.msra.mxu0 %v10154
  %14867 = vmatprep.mubr.bf16.mxu0 %v3232
  %14868 = vmatmul.mubr.bf16.gmra.mrb[0].mxu0 %v3231
  %v14869 = vpop.f32.mrb[0].mxu0
  %v14870 = vadd.f32 %v14830, %v14869
  %v14871 = vpop.f32.mrb[0].mxu0
  %v14872 = vpop.f32.mrb[0].mxu0
  %v14873 = vpop.f32.mrb[0].mxu0
  %14874 = vdwg.mxu0
  %14875 = vmatprep.subr.bf16.mxu0 0
  %14876 = vmatpush1.bf16.msra.mxu0 %v10155
  %14877 = vmatprep.subr.bf16.mxu0 0
  %14878 = vmatpush1.bf16.msra.mxu0 %v10156
  %14879 = vmatprep.subr.bf16.mxu0 0
  %14880 = vmatpush1.bf16.msra.mxu0 %v10157
  %14881 = vmatprep.subr.bf16.mxu0 0
  %14882 = vmatpush1.bf16.msra.mxu0 %v10158
  %14883 = vmatprep.subr.bf16.mxu0 0
  %14884 = vmatpush1.bf16.msra.mxu0 %v10159
  %14885 = vmatprep.subr.bf16.mxu0 0
  %14886 = vmatpush1.bf16.msra.mxu0 %v10160
  %14887 = vmatprep.subr.bf16.mxu0 0
  %14888 = vmatpush1.bf16.msra.mxu0 %v10161
  %14889 = vmatprep.subr.bf16.mxu0 0
  %14890 = vmatpush1.bf16.msra.mxu0 %v10162
  %14891 = vmatprep.subr.bf16.mxu0 0
  %14892 = vmatpush1.bf16.msra.mxu0 0
  %14893 = vmatprep.subr.bf16.mxu0 0
  %14894 = vmatpush1.bf16.msra.mxu0 0
  %14895 = vmatprep.subr.bf16.mxu0 0
  %14896 = vmatpush1.bf16.msra.mxu0 0
  %14897 = vmatprep.subr.bf16.mxu0 0
  %14898 = vmatpush1.bf16.msra.mxu0 0
  %14899 = vmatprep.subr.bf16.mxu0 0
  %14900 = vmatpush1.bf16.msra.mxu0 0
  %14901 = vmatprep.subr.bf16.mxu0 0
  %14902 = vmatpush1.bf16.msra.mxu0 0
  %14903 = vmatprep.subr.bf16.mxu0 0
  %14904 = vmatpush1.bf16.msra.mxu0 0
  %14905 = vmatprep.subr.bf16.mxu0 0
  %14906 = vmatpush1.bf16.msra.mxu0 0
  %14907 = vmatprep.mubr.bf16.mxu0 0
  %14908 = vmatmul.mubr.bf16.gmra.mrb[0].mxu0 %v3233
  %v14909 = vpop.f32.mrb[0].mxu0
  %v14910 = vadd.f32 %v14870, %v14909
  %v14911 = vpop.f32.mrb[0].mxu0
  %v14912 = vpop.f32.mrb[0].mxu0
  %v14913 = vpop.f32.mrb[0].mxu0
  %14914 = vdwg.mxu0
  %14915 = vst [vmem:[%s3] sm:$0xff] %v14910
  // Predicated region
  $region14: #{vanilla_cnn_forward.3} parent=0 // pred_check
    _
  $region15: #{vanilla_cnn_forward.3} parent=0 // pred_check_branch
    %14917 = sbr.rel (0) target = $region17
  $region16: #{vanilla_cnn_forward.3} parent=0 // pred_region
    _
  $region17: #{vanilla_cnn_forward.3} parent=0 // pred_fallthru
    _
  // Predicated region
  $region18: #{vanilla_cnn_forward.3} parent=0 // pred_check
    _
  $region19: #{vanilla_cnn_forward.3} parent=0 // pred_check_branch
    %14919 = sbr.rel (0) target = $region21
  $region20: #{vanilla_cnn_forward.3} parent=0 // pred_region
    _
  $region21: #{vanilla_cnn_forward.3} parent=0 // pred_fallthru
    _

</llo_original>
